<compile_context>
chip_gen: v7x
topology: tpu7x:2x2x1
jax: 0.10.0
libtpu: 0.0.40
codegen_flags: <defaults>
</compile_context>

<pallas_src>
import functools

import numpy as np
import jax
import jax.numpy as jnp
from jax import lax
from jax.experimental import pallas as pl
from jax.experimental.pallas import tpu as pltpu

EPS = 1e-5
LANE = 128


def _round_up(x, m):
    return (x + m - 1) // m * m


def _basic_block1_kernel(x_ref, w1_ref, w2_ref, g1_ref, b1_ref, g2_ref, b2_ref,
                         out_ref, out1_ref, pbuf_ref, *, C):
    """Fused BasicBlock1 forward (stride=1, no downsample).

    x_ref    : (N, H, W, CI)      f32     NHWC input, channels zero-padded to CI
    w*_ref   : (9*CI, CP)         cdtype  3x3 HWIO weights, taps stacked along K
    g*/b*    : (1, CP)            f32     BN affine params, zero-padded to CP
    out*_ref : (N, H, W, C)       f32     outputs (channel-unpadded NHWC)
    pbuf_ref : (N, H+2, W+2, CI)  cdtype  spatially padded conv-input staging buf
    """
    N, H, W, CI = x_ref.shape
    CP = w1_ref.shape[-1]
    M = N * H * W
    inv_m = 1.0 / float(M)
    cdtype = pbuf_ref.dtype

    # Zero the staging buffer once: the 1-px halo must be 0 and it is identical
    # for both convs (the interior is overwritten each time).  pbuf is ~1.15x of
    # ONE activation (vs. the 9x im2col scratch it replaces), so this is cheap.
    pbuf_ref[...] = jnp.zeros_like(pbuf_ref)

    def conv3x3_bn(w_ref, g, b):
        # Nine shifted (M, CI) x (CI, CP) MXU matmuls, f32 accumulation.
        acc = None
        for kh in range(3):
            for kw in range(3):
                t = kh * 3 + kw
                lhs = pbuf_ref[:, kh:kh + H, kw:kw + W, :].reshape(M, CI)
                part = jnp.dot(lhs, w_ref[t * CI:(t + 1) * CI, :],
                               preferred_element_type=jnp.float32)
                acc = part if acc is None else acc + part
        # Training-mode batch statistics (per output channel, over N*H*W).
        s = jnp.sum(acc, axis=0, keepdims=True)
        sq = jnp.sum(acc * acc, axis=0, keepdims=True)
        mean = s * inv_m
        var = jnp.maximum(sq * inv_m - mean * mean, 0.0)
        scale = lax.rsqrt(var + EPS) * g
        shift = b - mean * scale
        return acc * scale + shift

    # ---- conv1 -> bn1 -> relu ----  (single cast of x to the compute dtype)
    pbuf_ref[:, 1:H + 1, 1:W + 1, :] = x_ref[...].astype(cdtype)
    h = jnp.maximum(conv3x3_bn(w1_ref, g1_ref[...], b1_ref[...]), 0.0)

    # ---- conv2 -> bn2 ----
    # Channels [C, CP) of h are exactly 0 (weights and gamma are zero-padded),
    # so storing h[:, :CI] keeps pbuf's channel-pad lanes zero; halo untouched.
    pbuf_ref[:, 1:H + 1, 1:W + 1, :] = (
        h[:, :CI].reshape(N, H, W, CI).astype(cdtype))
    z = conv3x3_bn(w2_ref, g2_ref[...], b2_ref[...])

    # ---- residual add + the two ReLUs ----
    zc = z[:, :C]
    xc = x_ref[...].reshape(M, CI)[:, :C]                 # residual, f32
    out_ref[...] = jnp.maximum(xc + zc, 0.0).reshape(N, H, W, C).astype(out_ref.dtype)
    out1_ref[...] = jnp.maximum(zc, 0.0).reshape(N, H, W, C).astype(out1_ref.dtype)


def basic_block1(x_nchw, w1_hwio, w2_hwio, g1, b1, g2, b2, *,
                 compute_dtype=jnp.bfloat16):
    """x_nchw: (N, C, H, W) f32; conv weights in HWIO layout (3, 3, C, C).

    Returns (out, out1) in NCHW, matching the PyTorch module.
    """
    N, C, H, W = x_nchw.shape
    assert w1_hwio.shape == (3, 3, C, C) and w2_hwio.shape == (3, 3, C, C), \
        "stride=1 / no downsample => inplanes must equal planes"

    # Output channels padded to a lane multiple (CP) so the matmul result and
    # the BN/ReLU epilogue stay lane-dense.  The CONTRACTION channel is padded
    # only to sublane granularity (CI) -- no wasteful K-pad to 128 when C < 128.
    CP = _round_up(C, LANE)
    ci_gran = max(8, 32 // np.dtype(compute_dtype).itemsize)   # 8 f32 / 16 bf16
    CI = _round_up(C, ci_gran)

    x_nhwc = jnp.transpose(x_nchw, (0, 2, 3, 1)).astype(jnp.float32)
    x_p = jnp.pad(x_nhwc, ((0, 0), (0, 0), (0, 0), (0, CI - C)))

    def prep_w(w):  # (3,3,C,C) HWIO -> (9*CI, CP), taps stacked along K
        w_p = jnp.pad(w, ((0, 0), (0, 0), (0, CI - C), (0, CP - C)))
        return w_p.reshape(9 * CI, CP).astype(compute_dtype)

    def prep_v(v):  # (C,) -> (1, CP); zero padding keeps pad channels exactly 0
        return jnp.pad(v, (0, CP - C)).reshape(1, CP).astype(jnp.float32)

    # Generation-aware VMEM budget (v5e/v6e: 128 MiB physical, v7x: 64 MiB).
    try:
        vmem_cap = pltpu.get_tpu_info().vmem_capacity_bytes
    except Exception:
        vmem_cap = 64 * 1024 * 1024
    vmem_limit = min(int(vmem_cap * 3 // 4), 100 * 1024 * 1024)

    vmem = pl.BlockSpec(memory_space=pltpu.MemorySpace.VMEM)
    out, out1 = pl.pallas_call(
        functools.partial(_basic_block1_kernel, C=C),
        out_shape=(jax.ShapeDtypeStruct((N, H, W, C), jnp.float32),
                   jax.ShapeDtypeStruct((N, H, W, C), jnp.float32)),
        in_specs=[vmem] * 7,
        out_specs=(vmem, vmem),
        scratch_shapes=[pltpu.VMEM((N, H + 2, W + 2, CI), compute_dtype)],
        compiler_params=pltpu.CompilerParams(vmem_limit_bytes=vmem_limit),
    )(x_p, prep_w(w1_hwio), prep_w(w2_hwio),
      prep_v(g1), prep_v(b1), prep_v(g2), prep_v(b2))

    # NHWC -> NCHW to match the PyTorch output convention.
    return (jnp.transpose(out, (0, 3, 1, 2)),
            jnp.transpose(out1, (0, 3, 1, 2)))


# ----------------------------- pure-JAX reference ---------------------------
def _reference(x_nchw, w1, w2, g1, b1, g2, b2):
    def conv(x, w):  # x NCHW, w (3,3,Cin,Cout) HWIO
        return lax.conv_general_dilated(
            x, w, window_strides=(1, 1), padding=((1, 1), (1, 1)),
            dimension_numbers=("NCHW", "HWIO", "NCHW"))

    def bn(y, g, b):
        mean = jnp.mean(y, axis=(0, 2, 3), keepdims=True)
        var = jnp.mean((y - mean) ** 2, axis=(0, 2, 3), keepdims=True)
        return (y - mean) * lax.rsqrt(var + EPS) * g.reshape(1, -1, 1, 1) \
               + b.reshape(1, -1, 1, 1)

    h = jnp.maximum(bn(conv(x_nchw, w1), g1, b1), 0.0)
    z = bn(conv(h, w2), g2, b2)
    return jnp.maximum(x_nchw + z, 0.0), jnp.maximum(z, 0.0)


if __name__ == "__main__":
    key = jax.random.PRNGKey(0)
    N, C, H, W = 2, 4, 16, 16          # inplanes = planes = 4, stride = 1
    k_x, k_w1, k_w2 = jax.random.split(key, 3)

    x = jax.random.normal(k_x, (N, C, H, W), jnp.float32)

    # kaiming_normal_(fan_out, relu): std = sqrt(2 / (Cout*3*3)); weights HWIO.
    fan_out = C * 3 * 3
    std = (2.0 / fan_out) ** 0.5
    w1 = jax.random.normal(k_w1, (3, 3, C, C), jnp.float32) * std
    w2 = jax.random.normal(k_w2, (3, 3, C, C), jnp.float32) * std
    g1 = jnp.ones((C,), jnp.float32)
    b1 = jnp.zeros((C,), jnp.float32)
    g2 = jnp.ones((C,), jnp.float32)
    b2 = jnp.zeros((C,), jnp.float32)

    ref_out, ref_out1 = _reference(x, w1, w2, g1, b1, g2, b2)

    # f32 MXU operands: tight correctness check.
    out, out1 = jax.block_until_ready(
        basic_block1(x, w1, w2, g1, b1, g2, b2, compute_dtype=jnp.float32))
    assert jnp.max(jnp.abs(out - ref_out)) < 2e-3, "f32 out mismatch vs reference"
    assert jnp.max(jnp.abs(out1 - ref_out1)) < 2e-3, "f32 out1 mismatch vs reference"

    # bf16 MXU operands (f32 accumulation; BN/ReLU/residual stay f32): perf default.
    outb, out1b = jax.block_until_ready(
        basic_block1(x, w1, w2, g1, b1, g2, b2, compute_dtype=jnp.bfloat16))
    assert jnp.max(jnp.abs(outb - ref_out)) < 1e-1, "bf16 out mismatch vs reference"
    assert jnp.max(jnp.abs(out1b - ref_out1)) < 1e-1, "bf16 out1 mismatch vs reference"

    print("KERNEL_OK")
</pallas_src>

<mosaic_0001>
module attributes {stable_mosaic.version = 11 : i64} {
  func.func @_basic_block1_kernel(%arg0: memref<2x16x16x8xf32, #tpu.memory_space<vmem>>, %arg1: memref<72x128xf32, #tpu.memory_space<vmem>>, %arg2: memref<72x128xf32, #tpu.memory_space<vmem>>, %arg3: memref<1x128xf32, #tpu.memory_space<vmem>>, %arg4: memref<1x128xf32, #tpu.memory_space<vmem>>, %arg5: memref<1x128xf32, #tpu.memory_space<vmem>>, %arg6: memref<1x128xf32, #tpu.memory_space<vmem>>, %arg7: memref<2x16x16x4xf32, #tpu.memory_space<vmem>>, %arg8: memref<2x16x16x4xf32, #tpu.memory_space<vmem>>, %arg9: memref<2x18x18x8xf32, #tpu.memory_space<vmem>>) attributes {dimension_semantics = [], scalar_prefetch = 0 : i64, scratch_operands = 1 : i64, tpu.core_type = #tpu.core_type<tc>} {
    %cst = arith.constant 0.000000e+00 : f32
    %0 = vector.broadcast %cst : f32 to vector<2x18x18x8xf32>
    %c0 = arith.constant 0 : index
    %c0_0 = arith.constant 0 : index
    %c0_1 = arith.constant 0 : index
    %c0_2 = arith.constant 0 : index
    %1 = vector.load %arg9[%c0, %c0_0, %c0_1, %c0_2] : memref<2x18x18x8xf32, #tpu.memory_space<vmem>>, vector<2x18x18x8xf32>
    tpu.vector_store %arg9[%c0, %c0_0, %c0_1, %c0_2], %0 {strides = array<i32>} : memref<2x18x18x8xf32, #tpu.memory_space<vmem>>, vector<2x18x18x8xf32>,
    %c0_3 = arith.constant 0 : index
    %c0_4 = arith.constant 0 : index
    %c0_5 = arith.constant 0 : index
    %c0_6 = arith.constant 0 : index
    %2 = vector.load %arg0[%c0_3, %c0_4, %c0_5, %c0_6] : memref<2x16x16x8xf32, #tpu.memory_space<vmem>>, vector<2x16x16x8xf32>
    %c0_7 = arith.constant 0 : index
    %c1 = arith.constant 1 : index
    %c1_8 = arith.constant 1 : index
    %c0_9 = arith.constant 0 : index
    %3 = vector.load %arg9[%c0_7, %c1, %c1_8, %c0_9] : memref<2x18x18x8xf32, #tpu.memory_space<vmem>>, vector<2x16x16x8xf32>
    tpu.vector_store %arg9[%c0_7, %c1, %c1_8, %c0_9], %2 {strides = array<i32>} : memref<2x18x18x8xf32, #tpu.memory_space<vmem>>, vector<2x16x16x8xf32>,
    %c0_10 = arith.constant 0 : index
    %c0_11 = arith.constant 0 : index
    %4 = vector.load %arg3[%c0_10, %c0_11] : memref<1x128xf32, #tpu.memory_space<vmem>>, vector<1x128xf32>
    %c0_12 = arith.constant 0 : index
    %c0_13 = arith.constant 0 : index
    %5 = vector.load %arg4[%c0_12, %c0_13] : memref<1x128xf32, #tpu.memory_space<vmem>>, vector<1x128xf32>
    %c0_14 = arith.constant 0 : index
    %c0_15 = arith.constant 0 : index
    %c0_16 = arith.constant 0 : index
    %c0_17 = arith.constant 0 : index
    %6 = vector.load %arg9[%c0_14, %c0_15, %c0_16, %c0_17] : memref<2x18x18x8xf32, #tpu.memory_space<vmem>>, vector<2x16x16x8xf32>
    %7 = vector.shape_cast %6 : vector<2x16x16x8xf32> to vector<512x8xf32>
    %c0_18 = arith.constant 0 : index
    %c0_19 = arith.constant 0 : index
    %8 = vector.load %arg1[%c0_18, %c0_19] : memref<72x128xf32, #tpu.memory_space<vmem>>, vector<8x128xf32>
    %cst_20 = arith.constant dense<0.000000e+00> : vector<512x128xf32>
    %9 = tpu.matmul %7, %8, %cst_20 {dimension_numbers = #tpu.dot_dimension_numbers<[1], [0], [0], [1], [0, 0, 1, 1], [], []>} : vector<512x8xf32>, vector<8x128xf32>, vector<512x128xf32> -> vector<512x128xf32>
    %c0_21 = arith.constant 0 : index
    %c0_22 = arith.constant 0 : index
    %c1_23 = arith.constant 1 : index
    %c0_24 = arith.constant 0 : index
    %10 = vector.load %arg9[%c0_21, %c0_22, %c1_23, %c0_24] : memref<2x18x18x8xf32, #tpu.memory_space<vmem>>, vector<2x16x16x8xf32>
    %11 = vector.shape_cast %10 : vector<2x16x16x8xf32> to vector<512x8xf32>
    %c8 = arith.constant 8 : index
    %c0_25 = arith.constant 0 : index
    %12 = vector.load %arg1[%c8, %c0_25] : memref<72x128xf32, #tpu.memory_space<vmem>>, vector<8x128xf32>
    %cst_26 = arith.constant dense<0.000000e+00> : vector<512x128xf32>
    %13 = tpu.matmul %11, %12, %cst_26 {dimension_numbers = #tpu.dot_dimension_numbers<[1], [0], [0], [1], [0, 0, 1, 1], [], []>} : vector<512x8xf32>, vector<8x128xf32>, vector<512x128xf32> -> vector<512x128xf32>
    %14 = arith.addf %9, %13 : vector<512x128xf32>
    %c0_27 = arith.constant 0 : index
    %c0_28 = arith.constant 0 : index
    %c2 = arith.constant 2 : index
    %c0_29 = arith.constant 0 : index
    %15 = vector.load %arg9[%c0_27, %c0_28, %c2, %c0_29] : memref<2x18x18x8xf32, #tpu.memory_space<vmem>>, vector<2x16x16x8xf32>
    %16 = vector.shape_cast %15 : vector<2x16x16x8xf32> to vector<512x8xf32>
    %c16 = arith.constant 16 : index
    %c0_30 = arith.constant 0 : index
    %17 = vector.load %arg1[%c16, %c0_30] : memref<72x128xf32, #tpu.memory_space<vmem>>, vector<8x128xf32>
    %cst_31 = arith.constant dense<0.000000e+00> : vector<512x128xf32>
    %18 = tpu.matmul %16, %17, %cst_31 {dimension_numbers = #tpu.dot_dimension_numbers<[1], [0], [0], [1], [0, 0, 1, 1], [], []>} : vector<512x8xf32>, vector<8x128xf32>, vector<512x128xf32> -> vector<512x128xf32>
    %19 = arith.addf %14, %18 : vector<512x128xf32>
    %c0_32 = arith.constant 0 : index
    %c1_33 = arith.constant 1 : index
    %c0_34 = arith.constant 0 : index
    %c0_35 = arith.constant 0 : index
    %20 = vector.load %arg9[%c0_32, %c1_33, %c0_34, %c0_35] : memref<2x18x18x8xf32, #tpu.memory_space<vmem>>, vector<2x16x16x8xf32>
    %21 = vector.shape_cast %20 : vector<2x16x16x8xf32> to vector<512x8xf32>
    %c24 = arith.constant 24 : index
    %c0_36 = arith.constant 0 : index
    %22 = vector.load %arg1[%c24, %c0_36] : memref<72x128xf32, #tpu.memory_space<vmem>>, vector<8x128xf32>
    %cst_37 = arith.constant dense<0.000000e+00> : vector<512x128xf32>
    %23 = tpu.matmul %21, %22, %cst_37 {dimension_numbers = #tpu.dot_dimension_numbers<[1], [0], [0], [1], [0, 0, 1, 1], [], []>} : vector<512x8xf32>, vector<8x128xf32>, vector<512x128xf32> -> vector<512x128xf32>
    %24 = arith.addf %19, %23 : vector<512x128xf32>
    %c0_38 = arith.constant 0 : index
    %c1_39 = arith.constant 1 : index
    %c1_40 = arith.constant 1 : index
    %c0_41 = arith.constant 0 : index
    %25 = vector.load %arg9[%c0_38, %c1_39, %c1_40, %c0_41] : memref<2x18x18x8xf32, #tpu.memory_space<vmem>>, vector<2x16x16x8xf32>
    %26 = vector.shape_cast %25 : vector<2x16x16x8xf32> to vector<512x8xf32>
    %c32 = arith.constant 32 : index
    %c0_42 = arith.constant 0 : index
    %27 = vector.load %arg1[%c32, %c0_42] : memref<72x128xf32, #tpu.memory_space<vmem>>, vector<8x128xf32>
    %cst_43 = arith.constant dense<0.000000e+00> : vector<512x128xf32>
    %28 = tpu.matmul %26, %27, %cst_43 {dimension_numbers = #tpu.dot_dimension_numbers<[1], [0], [0], [1], [0, 0, 1, 1], [], []>} : vector<512x8xf32>, vector<8x128xf32>, vector<512x128xf32> -> vector<512x128xf32>
    %29 = arith.addf %24, %28 : vector<512x128xf32>
    %c0_44 = arith.constant 0 : index
    %c1_45 = arith.constant 1 : index
    %c2_46 = arith.constant 2 : index
    %c0_47 = arith.constant 0 : index
    %30 = vector.load %arg9[%c0_44, %c1_45, %c2_46, %c0_47] : memref<2x18x18x8xf32, #tpu.memory_space<vmem>>, vector<2x16x16x8xf32>
    %31 = vector.shape_cast %30 : vector<2x16x16x8xf32> to vector<512x8xf32>
    %c40 = arith.constant 40 : index
    %c0_48 = arith.constant 0 : index
    %32 = vector.load %arg1[%c40, %c0_48] : memref<72x128xf32, #tpu.memory_space<vmem>>, vector<8x128xf32>
    %cst_49 = arith.constant dense<0.000000e+00> : vector<512x128xf32>
    %33 = tpu.matmul %31, %32, %cst_49 {dimension_numbers = #tpu.dot_dimension_numbers<[1], [0], [0], [1], [0, 0, 1, 1], [], []>} : vector<512x8xf32>, vector<8x128xf32>, vector<512x128xf32> -> vector<512x128xf32>
    %34 = arith.addf %29, %33 : vector<512x128xf32>
    %c0_50 = arith.constant 0 : index
    %c2_51 = arith.constant 2 : index
    %c0_52 = arith.constant 0 : index
    %c0_53 = arith.constant 0 : index
    %35 = vector.load %arg9[%c0_50, %c2_51, %c0_52, %c0_53] : memref<2x18x18x8xf32, #tpu.memory_space<vmem>>, vector<2x16x16x8xf32>
    %36 = vector.shape_cast %35 : vector<2x16x16x8xf32> to vector<512x8xf32>
    %c48 = arith.constant 48 : index
    %c0_54 = arith.constant 0 : index
    %37 = vector.load %arg1[%c48, %c0_54] : memref<72x128xf32, #tpu.memory_space<vmem>>, vector<8x128xf32>
    %cst_55 = arith.constant dense<0.000000e+00> : vector<512x128xf32>
    %38 = tpu.matmul %36, %37, %cst_55 {dimension_numbers = #tpu.dot_dimension_numbers<[1], [0], [0], [1], [0, 0, 1, 1], [], []>} : vector<512x8xf32>, vector<8x128xf32>, vector<512x128xf32> -> vector<512x128xf32>
    %39 = arith.addf %34, %38 : vector<512x128xf32>
    %c0_56 = arith.constant 0 : index
    %c2_57 = arith.constant 2 : index
    %c1_58 = arith.constant 1 : index
    %c0_59 = arith.constant 0 : index
    %40 = vector.load %arg9[%c0_56, %c2_57, %c1_58, %c0_59] : memref<2x18x18x8xf32, #tpu.memory_space<vmem>>, vector<2x16x16x8xf32>
    %41 = vector.shape_cast %40 : vector<2x16x16x8xf32> to vector<512x8xf32>
    %c56 = arith.constant 56 : index
    %c0_60 = arith.constant 0 : index
    %42 = vector.load %arg1[%c56, %c0_60] : memref<72x128xf32, #tpu.memory_space<vmem>>, vector<8x128xf32>
    %cst_61 = arith.constant dense<0.000000e+00> : vector<512x128xf32>
    %43 = tpu.matmul %41, %42, %cst_61 {dimension_numbers = #tpu.dot_dimension_numbers<[1], [0], [0], [1], [0, 0, 1, 1], [], []>} : vector<512x8xf32>, vector<8x128xf32>, vector<512x128xf32> -> vector<512x128xf32>
    %44 = arith.addf %39, %43 : vector<512x128xf32>
    %c0_62 = arith.constant 0 : index
    %c2_63 = arith.constant 2 : index
    %c2_64 = arith.constant 2 : index
    %c0_65 = arith.constant 0 : index
    %45 = vector.load %arg9[%c0_62, %c2_63, %c2_64, %c0_65] : memref<2x18x18x8xf32, #tpu.memory_space<vmem>>, vector<2x16x16x8xf32>
    %46 = vector.shape_cast %45 : vector<2x16x16x8xf32> to vector<512x8xf32>
    %c64 = arith.constant 64 : index
    %c0_66 = arith.constant 0 : index
    %47 = vector.load %arg1[%c64, %c0_66] : memref<72x128xf32, #tpu.memory_space<vmem>>, vector<8x128xf32>
    %cst_67 = arith.constant dense<0.000000e+00> : vector<512x128xf32>
    %48 = tpu.matmul %46, %47, %cst_67 {dimension_numbers = #tpu.dot_dimension_numbers<[1], [0], [0], [1], [0, 0, 1, 1], [], []>} : vector<512x8xf32>, vector<8x128xf32>, vector<512x128xf32> -> vector<512x128xf32>
    %49 = arith.addf %44, %48 : vector<512x128xf32>
    %cst_68 = arith.constant dense<0.000000e+00> : vector<128xf32>
    %50 = vector.multi_reduction <add>, %49, %cst_68 [0] : vector<512x128xf32> to vector<128xf32>
    %51 = vector.shape_cast %50 : vector<128xf32> to vector<1x128xf32>
    %52 = arith.mulf %49, %49 : vector<512x128xf32>
    %cst_69 = arith.constant dense<0.000000e+00> : vector<128xf32>
    %53 = vector.multi_reduction <add>, %52, %cst_69 [0] : vector<512x128xf32> to vector<128xf32>
    %54 = vector.shape_cast %53 : vector<128xf32> to vector<1x128xf32>
    %cst_70 = arith.constant 0.001953125 : f32
    %55 = vector.broadcast %cst_70 : f32 to vector<1x128xf32>
    %56 = arith.mulf %51, %55 : vector<1x128xf32>
    %cst_71 = arith.constant 0.001953125 : f32
    %57 = vector.broadcast %cst_71 : f32 to vector<1x128xf32>
    %58 = arith.mulf %54, %57 : vector<1x128xf32>
    %59 = arith.mulf %56, %56 : vector<1x128xf32>
    %60 = arith.subf %58, %59 : vector<1x128xf32>
    %cst_72 = arith.constant 0.000000e+00 : f32
    %61 = vector.broadcast %cst_72 : f32 to vector<1x128xf32>
    %62 = arith.maximumf %60, %61 : vector<1x128xf32>
    %cst_73 = arith.constant 9.99999974E-6 : f32
    %63 = vector.broadcast %cst_73 : f32 to vector<1x128xf32>
    %64 = arith.addf %62, %63 : vector<1x128xf32>
    %65 = math.rsqrt %64 : vector<1x128xf32>
    %66 = arith.mulf %65, %4 : vector<1x128xf32>
    %67 = arith.mulf %56, %66 : vector<1x128xf32>
    %68 = arith.subf %5, %67 : vector<1x128xf32>
    %69 = vector.broadcast %66 : vector<1x128xf32> to vector<512x128xf32>
    %70 = arith.mulf %49, %69 : vector<512x128xf32>
    %71 = vector.broadcast %68 : vector<1x128xf32> to vector<512x128xf32>
    %72 = arith.addf %70, %71 : vector<512x128xf32>
    %cst_74 = arith.constant 0.000000e+00 : f32
    %73 = vector.broadcast %cst_74 : f32 to vector<512x128xf32>
    %74 = arith.maximumf %72, %73 : vector<512x128xf32>
    %75 = vector.extract_strided_slice %74 {offsets = [0, 0], sizes = [512, 8], strides = [1, 1]} : vector<512x128xf32> to vector<512x8xf32>
    %76 = vector.shape_cast %75 : vector<512x8xf32> to vector<2x16x16x8xf32>
    %c0_75 = arith.constant 0 : index
    %c1_76 = arith.constant 1 : index
    %c1_77 = arith.constant 1 : index
    %c0_78 = arith.constant 0 : index
    %77 = vector.load %arg9[%c0_75, %c1_76, %c1_77, %c0_78] : memref<2x18x18x8xf32, #tpu.memory_space<vmem>>, vector<2x16x16x8xf32>
    tpu.vector_store %arg9[%c0_75, %c1_76, %c1_77, %c0_78], %76 {strides = array<i32>} : memref<2x18x18x8xf32, #tpu.memory_space<vmem>>, vector<2x16x16x8xf32>,
    %c0_79 = arith.constant 0 : index
    %c0_80 = arith.constant 0 : index
    %78 = vector.load %arg5[%c0_79, %c0_80] : memref<1x128xf32, #tpu.memory_space<vmem>>, vector<1x128xf32>
    %c0_81 = arith.constant 0 : index
    %c0_82 = arith.constant 0 : index
    %79 = vector.load %arg6[%c0_81, %c0_82] : memref<1x128xf32, #tpu.memory_space<vmem>>, vector<1x128xf32>
    %c0_83 = arith.constant 0 : index
    %c0_84 = arith.constant 0 : index
    %c0_85 = arith.constant 0 : index
    %c0_86 = arith.constant 0 : index
    %80 = vector.load %arg9[%c0_83, %c0_84, %c0_85, %c0_86] : memref<2x18x18x8xf32, #tpu.memory_space<vmem>>, vector<2x16x16x8xf32>
    %81 = vector.shape_cast %80 : vector<2x16x16x8xf32> to vector<512x8xf32>
    %c0_87 = arith.constant 0 : index
    %c0_88 = arith.constant 0 : index
    %82 = vector.load %arg2[%c0_87, %c0_88] : memref<72x128xf32, #tpu.memory_space<vmem>>, vector<8x128xf32>
    %cst_89 = arith.constant dense<0.000000e+00> : vector<512x128xf32>
    %83 = tpu.matmul %81, %82, %cst_89 {dimension_numbers = #tpu.dot_dimension_numbers<[1], [0], [0], [1], [0, 0, 1, 1], [], []>} : vector<512x8xf32>, vector<8x128xf32>, vector<512x128xf32> -> vector<512x128xf32>
    %c0_90 = arith.constant 0 : index
    %c0_91 = arith.constant 0 : index
    %c1_92 = arith.constant 1 : index
    %c0_93 = arith.constant 0 : index
    %84 = vector.load %arg9[%c0_90, %c0_91, %c1_92, %c0_93] : memref<2x18x18x8xf32, #tpu.memory_space<vmem>>, vector<2x16x16x8xf32>
    %85 = vector.shape_cast %84 : vector<2x16x16x8xf32> to vector<512x8xf32>
    %c8_94 = arith.constant 8 : index
    %c0_95 = arith.constant 0 : index
    %86 = vector.load %arg2[%c8_94, %c0_95] : memref<72x128xf32, #tpu.memory_space<vmem>>, vector<8x128xf32>
    %cst_96 = arith.constant dense<0.000000e+00> : vector<512x128xf32>
    %87 = tpu.matmul %85, %86, %cst_96 {dimension_numbers = #tpu.dot_dimension_numbers<[1], [0], [0], [1], [0, 0, 1, 1], [], []>} : vector<512x8xf32>, vector<8x128xf32>, vector<512x128xf32> -> vector<512x128xf32>
    %88 = arith.addf %83, %87 : vector<512x128xf32>
    %c0_97 = arith.constant 0 : index
    %c0_98 = arith.constant 0 : index
    %c2_99 = arith.constant 2 : index
    %c0_100 = arith.constant 0 : index
    %89 = vector.load %arg9[%c0_97, %c0_98, %c2_99, %c0_100] : memref<2x18x18x8xf32, #tpu.memory_space<vmem>>, vector<2x16x16x8xf32>
    %90 = vector.shape_cast %89 : vector<2x16x16x8xf32> to vector<512x8xf32>
    %c16_101 = arith.constant 16 : index
    %c0_102 = arith.constant 0 : index
    %91 = vector.load %arg2[%c16_101, %c0_102] : memref<72x128xf32, #tpu.memory_space<vmem>>, vector<8x128xf32>
    %cst_103 = arith.constant dense<0.000000e+00> : vector<512x128xf32>
    %92 = tpu.matmul %90, %91, %cst_103 {dimension_numbers = #tpu.dot_dimension_numbers<[1], [0], [0], [1], [0, 0, 1, 1], [], []>} : vector<512x8xf32>, vector<8x128xf32>, vector<512x128xf32> -> vector<512x128xf32>
    %93 = arith.addf %88, %92 : vector<512x128xf32>
    %c0_104 = arith.constant 0 : index
    %c1_105 = arith.constant 1 : index
    %c0_106 = arith.constant 0 : index
    %c0_107 = arith.constant 0 : index
    %94 = vector.load %arg9[%c0_104, %c1_105, %c0_106, %c0_107] : memref<2x18x18x8xf32, #tpu.memory_space<vmem>>, vector<2x16x16x8xf32>
    %95 = vector.shape_cast %94 : vector<2x16x16x8xf32> to vector<512x8xf32>
    %c24_108 = arith.constant 24 : index
    %c0_109 = arith.constant 0 : index
    %96 = vector.load %arg2[%c24_108, %c0_109] : memref<72x128xf32, #tpu.memory_space<vmem>>, vector<8x128xf32>
    %cst_110 = arith.constant dense<0.000000e+00> : vector<512x128xf32>
    %97 = tpu.matmul %95, %96, %cst_110 {dimension_numbers = #tpu.dot_dimension_numbers<[1], [0], [0], [1], [0, 0, 1, 1], [], []>} : vector<512x8xf32>, vector<8x128xf32>, vector<512x128xf32> -> vector<512x128xf32>
    %98 = arith.addf %93, %97 : vector<512x128xf32>
    %c0_111 = arith.constant 0 : index
    %c1_112 = arith.constant 1 : index
    %c1_113 = arith.constant 1 : index
    %c0_114 = arith.constant 0 : index
    %99 = vector.load %arg9[%c0_111, %c1_112, %c1_113, %c0_114] : memref<2x18x18x8xf32, #tpu.memory_space<vmem>>, vector<2x16x16x8xf32>
    %100 = vector.shape_cast %99 : vector<2x16x16x8xf32> to vector<512x8xf32>
    %c32_115 = arith.constant 32 : index
    %c0_116 = arith.constant 0 : index
    %101 = vector.load %arg2[%c32_115, %c0_116] : memref<72x128xf32, #tpu.memory_space<vmem>>, vector<8x128xf32>
    %cst_117 = arith.constant dense<0.000000e+00> : vector<512x128xf32>
    %102 = tpu.matmul %100, %101, %cst_117 {dimension_numbers = #tpu.dot_dimension_numbers<[1], [0], [0], [1], [0, 0, 1, 1], [], []>} : vector<512x8xf32>, vector<8x128xf32>, vector<512x128xf32> -> vector<512x128xf32>
    %103 = arith.addf %98, %102 : vector<512x128xf32>
    %c0_118 = arith.constant 0 : index
    %c1_119 = arith.constant 1 : index
    %c2_120 = arith.constant 2 : index
    %c0_121 = arith.constant 0 : index
    %104 = vector.load %arg9[%c0_118, %c1_119, %c2_120, %c0_121] : memref<2x18x18x8xf32, #tpu.memory_space<vmem>>, vector<2x16x16x8xf32>
    %105 = vector.shape_cast %104 : vector<2x16x16x8xf32> to vector<512x8xf32>
    %c40_122 = arith.constant 40 : index
    %c0_123 = arith.constant 0 : index
    %106 = vector.load %arg2[%c40_122, %c0_123] : memref<72x128xf32, #tpu.memory_space<vmem>>, vector<8x128xf32>
    %cst_124 = arith.constant dense<0.000000e+00> : vector<512x128xf32>
    %107 = tpu.matmul %105, %106, %cst_124 {dimension_numbers = #tpu.dot_dimension_numbers<[1], [0], [0], [1], [0, 0, 1, 1], [], []>} : vector<512x8xf32>, vector<8x128xf32>, vector<512x128xf32> -> vector<512x128xf32>
    %108 = arith.addf %103, %107 : vector<512x128xf32>
    %c0_125 = arith.constant 0 : index
    %c2_126 = arith.constant 2 : index
    %c0_127 = arith.constant 0 : index
    %c0_128 = arith.constant 0 : index
    %109 = vector.load %arg9[%c0_125, %c2_126, %c0_127, %c0_128] : memref<2x18x18x8xf32, #tpu.memory_space<vmem>>, vector<2x16x16x8xf32>
    %110 = vector.shape_cast %109 : vector<2x16x16x8xf32> to vector<512x8xf32>
    %c48_129 = arith.constant 48 : index
    %c0_130 = arith.constant 0 : index
    %111 = vector.load %arg2[%c48_129, %c0_130] : memref<72x128xf32, #tpu.memory_space<vmem>>, vector<8x128xf32>
    %cst_131 = arith.constant dense<0.000000e+00> : vector<512x128xf32>
    %112 = tpu.matmul %110, %111, %cst_131 {dimension_numbers = #tpu.dot_dimension_numbers<[1], [0], [0], [1], [0, 0, 1, 1], [], []>} : vector<512x8xf32>, vector<8x128xf32>, vector<512x128xf32> -> vector<512x128xf32>
    %113 = arith.addf %108, %112 : vector<512x128xf32>
    %c0_132 = arith.constant 0 : index
    %c2_133 = arith.constant 2 : index
    %c1_134 = arith.constant 1 : index
    %c0_135 = arith.constant 0 : index
    %114 = vector.load %arg9[%c0_132, %c2_133, %c1_134, %c0_135] : memref<2x18x18x8xf32, #tpu.memory_space<vmem>>, vector<2x16x16x8xf32>
    %115 = vector.shape_cast %114 : vector<2x16x16x8xf32> to vector<512x8xf32>
    %c56_136 = arith.constant 56 : index
    %c0_137 = arith.constant 0 : index
    %116 = vector.load %arg2[%c56_136, %c0_137] : memref<72x128xf32, #tpu.memory_space<vmem>>, vector<8x128xf32>
    %cst_138 = arith.constant dense<0.000000e+00> : vector<512x128xf32>
    %117 = tpu.matmul %115, %116, %cst_138 {dimension_numbers = #tpu.dot_dimension_numbers<[1], [0], [0], [1], [0, 0, 1, 1], [], []>} : vector<512x8xf32>, vector<8x128xf32>, vector<512x128xf32> -> vector<512x128xf32>
    %118 = arith.addf %113, %117 : vector<512x128xf32>
    %c0_139 = arith.constant 0 : index
    %c2_140 = arith.constant 2 : index
    %c2_141 = arith.constant 2 : index
    %c0_142 = arith.constant 0 : index
    %119 = vector.load %arg9[%c0_139, %c2_140, %c2_141, %c0_142] : memref<2x18x18x8xf32, #tpu.memory_space<vmem>>, vector<2x16x16x8xf32>
    %120 = vector.shape_cast %119 : vector<2x16x16x8xf32> to vector<512x8xf32>
    %c64_143 = arith.constant 64 : index
    %c0_144 = arith.constant 0 : index
    %121 = vector.load %arg2[%c64_143, %c0_144] : memref<72x128xf32, #tpu.memory_space<vmem>>, vector<8x128xf32>
    %cst_145 = arith.constant dense<0.000000e+00> : vector<512x128xf32>
    %122 = tpu.matmul %120, %121, %cst_145 {dimension_numbers = #tpu.dot_dimension_numbers<[1], [0], [0], [1], [0, 0, 1, 1], [], []>} : vector<512x8xf32>, vector<8x128xf32>, vector<512x128xf32> -> vector<512x128xf32>
    %123 = arith.addf %118, %122 : vector<512x128xf32>
    %cst_146 = arith.constant dense<0.000000e+00> : vector<128xf32>
    %124 = vector.multi_reduction <add>, %123, %cst_146 [0] : vector<512x128xf32> to vector<128xf32>
    %125 = vector.shape_cast %124 : vector<128xf32> to vector<1x128xf32>
    %126 = arith.mulf %123, %123 : vector<512x128xf32>
    %cst_147 = arith.constant dense<0.000000e+00> : vector<128xf32>
    %127 = vector.multi_reduction <add>, %126, %cst_147 [0] : vector<512x128xf32> to vector<128xf32>
    %128 = vector.shape_cast %127 : vector<128xf32> to vector<1x128xf32>
    %cst_148 = arith.constant 0.001953125 : f32
    %129 = vector.broadcast %cst_148 : f32 to vector<1x128xf32>
    %130 = arith.mulf %125, %129 : vector<1x128xf32>
    %cst_149 = arith.constant 0.001953125 : f32
    %131 = vector.broadcast %cst_149 : f32 to vector<1x128xf32>
    %132 = arith.mulf %128, %131 : vector<1x128xf32>
    %133 = arith.mulf %130, %130 : vector<1x128xf32>
    %134 = arith.subf %132, %133 : vector<1x128xf32>
    %cst_150 = arith.constant 0.000000e+00 : f32
    %135 = vector.broadcast %cst_150 : f32 to vector<1x128xf32>
    %136 = arith.maximumf %134, %135 : vector<1x128xf32>
    %cst_151 = arith.constant 9.99999974E-6 : f32
    %137 = vector.broadcast %cst_151 : f32 to vector<1x128xf32>
    %138 = arith.addf %136, %137 : vector<1x128xf32>
    %139 = math.rsqrt %138 : vector<1x128xf32>
    %140 = arith.mulf %139, %78 : vector<1x128xf32>
    %141 = arith.mulf %130, %140 : vector<1x128xf32>
    %142 = arith.subf %79, %141 : vector<1x128xf32>
    %143 = vector.broadcast %140 : vector<1x128xf32> to vector<512x128xf32>
    %144 = arith.mulf %123, %143 : vector<512x128xf32>
    %145 = vector.broadcast %142 : vector<1x128xf32> to vector<512x128xf32>
    %146 = arith.addf %144, %145 : vector<512x128xf32>
    %147 = vector.extract_strided_slice %146 {offsets = [0, 0], sizes = [512, 4], strides = [1, 1]} : vector<512x128xf32> to vector<512x4xf32>
    %c0_152 = arith.constant 0 : index
    %c0_153 = arith.constant 0 : index
    %c0_154 = arith.constant 0 : index
    %c0_155 = arith.constant 0 : index
    %148 = vector.load %arg0[%c0_152, %c0_153, %c0_154, %c0_155] : memref<2x16x16x8xf32, #tpu.memory_space<vmem>>, vector<2x16x16x8xf32>
    %149 = vector.shape_cast %148 : vector<2x16x16x8xf32> to vector<512x8xf32>
    %150 = vector.extract_strided_slice %149 {offsets = [0, 0], sizes = [512, 4], strides = [1, 1]} : vector<512x8xf32> to vector<512x4xf32>
    %151 = arith.addf %150, %147 : vector<512x4xf32>
    %cst_156 = arith.constant 0.000000e+00 : f32
    %152 = vector.broadcast %cst_156 : f32 to vector<512x4xf32>
    %153 = arith.maximumf %151, %152 : vector<512x4xf32>
    %154 = vector.shape_cast %153 : vector<512x4xf32> to vector<2x16x16x4xf32>
    %c0_157 = arith.constant 0 : index
    %c0_158 = arith.constant 0 : index
    %c0_159 = arith.constant 0 : index
    %c0_160 = arith.constant 0 : index
    %155 = vector.load %arg7[%c0_157, %c0_158, %c0_159, %c0_160] : memref<2x16x16x4xf32, #tpu.memory_space<vmem>>, vector<2x16x16x4xf32>
    tpu.vector_store %arg7[%c0_157, %c0_158, %c0_159, %c0_160], %154 {strides = array<i32>} : memref<2x16x16x4xf32, #tpu.memory_space<vmem>>, vector<2x16x16x4xf32>,
    %cst_161 = arith.constant 0.000000e+00 : f32
    %156 = vector.broadcast %cst_161 : f32 to vector<512x4xf32>
    %157 = arith.maximumf %147, %156 : vector<512x4xf32>
    %158 = vector.shape_cast %157 : vector<512x4xf32> to vector<2x16x16x4xf32>
    %c0_162 = arith.constant 0 : index
    %c0_163 = arith.constant 0 : index
    %c0_164 = arith.constant 0 : index
    %c0_165 = arith.constant 0 : index
    %159 = vector.load %arg8[%c0_162, %c0_163, %c0_164, %c0_165] : memref<2x16x16x4xf32, #tpu.memory_space<vmem>>, vector<2x16x16x4xf32>
    tpu.vector_store %arg8[%c0_162, %c0_163, %c0_164, %c0_165], %158 {strides = array<i32>} : memref<2x16x16x4xf32, #tpu.memory_space<vmem>>, vector<2x16x16x4xf32>,
    return
  }
}

</mosaic_0001>

<llo_original>
// kernel: tpu_custom_call.1
$region0: #{tpu_custom_call.1}
  #allocation0 [shape = 'u32[]', space=smem, size = 0x4, offset = 0x4, fixed_abs, tag = 'smem constant byte address 0x4 - core index']
  #allocation1 [shape = 'u32[144,128]{1,0:T(1,128)}', space=vmem, size = 0x12000, scoped, tag = 'internal scratch']
  #allocation2 [shape = 'f32[2,18,18,8]{3,2,1,0:T(8,128)}', space=vmem, size = 0x6c000, scoped, tag = 'scratch operand']
  %s0 = inlined_call_operand.vmem [shape: f32[2,16,16,8], index: 0, kind: input, shape index: {}]
  %s1 = inlined_call_operand.vmem [shape: f32[72,128], index: 1, kind: input, shape index: {}]
  %s2 = inlined_call_operand.vmem [shape: f32[72,128], index: 2, kind: input, shape index: {}]
  %s3 = inlined_call_operand.vmem [shape: f32[1,128], index: 3, kind: input, shape index: {}]
  %s4 = inlined_call_operand.vmem [shape: f32[1,128], index: 4, kind: input, shape index: {}]
  %s5 = inlined_call_operand.vmem [shape: f32[1,128], index: 5, kind: input, shape index: {}]
  %s6 = inlined_call_operand.vmem [shape: f32[1,128], index: 6, kind: input, shape index: {}]
  %s7 = inlined_call_operand.vmem [shape: f32[2,16,16,4], index: 7, kind: output, shape index: {0}]
  %s8 = inlined_call_operand.vmem [shape: f32[2,16,16,4], index: 8, kind: output, shape index: {1}]
  %9 = xla_tuple %s7, %s8
  %s10 = sld [smem:[#allocation0]]
  $region46: #{tpu_custom_call.1} parent=0
    _
  %s12 = ssub.s32 1, %s10
  %s13 = scalar_select 0, %s12, %s10
  // Predicated region
  $region2: #{tpu_custom_call.1} parent=0 // pred_check
    _
  $region3: #{tpu_custom_call.1} parent=0 // pred_check_branch
    %15 = sbr.rel (0) target = $region5
  $region4: #{tpu_custom_call.1} parent=0 // pred_region
    _
  $region5: #{tpu_custom_call.1} parent=0 // pred_fallthru
    _
  // Predicated region
  $region6: #{tpu_custom_call.1} parent=0 // pred_check
    _
  $region7: #{tpu_custom_call.1} parent=0 // pred_check_branch
    %17 = sbr.rel (0) target = $region9
  $region8: #{tpu_custom_call.1} parent=0 // pred_region
    _
  $region9: #{tpu_custom_call.1} parent=0 // pred_fallthru
    _
  // Predicated region
  $region10: #{tpu_custom_call.1} parent=0 // pred_check
    _
  $region11: #{tpu_custom_call.1} parent=0 // pred_check_branch
    %19 = sbr.rel (0) target = $region13
  $region12: #{tpu_custom_call.1} parent=0 // pred_region
    _
  $region13: #{tpu_custom_call.1} parent=0 // pred_fallthru
    _
  // Predicated region
  $region14: #{tpu_custom_call.1} parent=0 // pred_check
    _
  $region15: #{tpu_custom_call.1} parent=0 // pred_check_branch
    %21 = sbr.rel (0) target = $region17
  $region16: #{tpu_custom_call.1} parent=0 // pred_region
    _
  $region17: #{tpu_custom_call.1} parent=0 // pred_fallthru
    _
  // Predicated region
  $region18: #{tpu_custom_call.1} parent=0 // pred_check
    _
  $region19: #{tpu_custom_call.1} parent=0 // pred_check_branch
    %23 = sbr.rel (0) target = $region21
  $region20: #{tpu_custom_call.1} parent=0 // pred_region
    _
  $region21: #{tpu_custom_call.1} parent=0 // pred_fallthru
    _
  // Predicated region
  $region22: #{tpu_custom_call.1} parent=0 // pred_check
    _
  $region23: #{tpu_custom_call.1} parent=0 // pred_check_branch
    %25 = sbr.rel (0) target = $region25
  $region24: #{tpu_custom_call.1} parent=0 // pred_region
    _
  $region25: #{tpu_custom_call.1} parent=0 // pred_fallthru
    _
  // Predicated region
  $region26: #{tpu_custom_call.1} parent=0 // pred_check
    _
  $region27: #{tpu_custom_call.1} parent=0 // pred_check_branch
    %27 = sbr.rel (0) target = $region29
  $region28: #{tpu_custom_call.1} parent=0 // pred_region
    _
  $region29: #{tpu_custom_call.1} parent=0 // pred_fallthru
    _
  %vm28 = vcmask 64512
  %29 = vst.msk [vmem:[#allocation2] sm:$0xff] %vm28, 0.0
  %30 = vst.msk [vmem:[#allocation2 + $0x8] sm:$0xff] %vm28, 0.0
  %vm31 = vcmask 58368
  %32 = vst.msk [vmem:[#allocation2 + $0x10] sm:$0x3] %vm31, 0.0
  %33 = vst.msk [vmem:[#allocation2 + $0x18] sm:$0xff] %vm28, 0.0
  %34 = vst.msk [vmem:[#allocation2 + $0x20] sm:$0xff] %vm28, 0.0
  %35 = vst.msk [vmem:[#allocation2 + $0x28] sm:$0x3] %vm31, 0.0
  %36 = vst.msk [vmem:[#allocation2 + $0x30] sm:$0xff] %vm28, 0.0
  %37 = vst.msk [vmem:[#allocation2 + $0x38] sm:$0xff] %vm28, 0.0
  %38 = vst.msk [vmem:[#allocation2 + $0x40] sm:$0x3] %vm31, 0.0
  %39 = vst.msk [vmem:[#allocation2 + $0x48] sm:$0xff] %vm28, 0.0
  %40 = vst.msk [vmem:[#allocation2 + $0x50] sm:$0xff] %vm28, 0.0
  %41 = vst.msk [vmem:[#allocation2 + $0x58] sm:$0x3] %vm31, 0.0
  %42 = vst.msk [vmem:[#allocation2 + $0x60] sm:$0xff] %vm28, 0.0
  %43 = vst.msk [vmem:[#allocation2 + $0x68] sm:$0xff] %vm28, 0.0
  %44 = vst.msk [vmem:[#allocation2 + $0x70] sm:$0x3] %vm31, 0.0
  %45 = vst.msk [vmem:[#allocation2 + $0x78] sm:$0xff] %vm28, 0.0
  %46 = vst.msk [vmem:[#allocation2 + $0x80] sm:$0xff] %vm28, 0.0
  %47 = vst.msk [vmem:[#allocation2 + $0x88] sm:$0x3] %vm31, 0.0
  %48 = vst.msk [vmem:[#allocation2 + $0x90] sm:$0xff] %vm28, 0.0
  %49 = vst.msk [vmem:[#allocation2 + $0x98] sm:$0xff] %vm28, 0.0
  %50 = vst.msk [vmem:[#allocation2 + $0xa0] sm:$0x3] %vm31, 0.0
  %51 = vst.msk [vmem:[#allocation2 + $0xa8] sm:$0xff] %vm28, 0.0
  %52 = vst.msk [vmem:[#allocation2 + $0xb0] sm:$0xff] %vm28, 0.0
  %53 = vst.msk [vmem:[#allocation2 + $0xb8] sm:$0x3] %vm31, 0.0
  %54 = vst.msk [vmem:[#allocation2 + $0xc0] sm:$0xff] %vm28, 0.0
  %55 = vst.msk [vmem:[#allocation2 + $0xc8] sm:$0xff] %vm28, 0.0
  %56 = vst.msk [vmem:[#allocation2 + $0xd0] sm:$0x3] %vm31, 0.0
  %57 = vst.msk [vmem:[#allocation2 + $0xd8] sm:$0xff] %vm28, 0.0
  %58 = vst.msk [vmem:[#allocation2 + $0xe0] sm:$0xff] %vm28, 0.0
  %59 = vst.msk [vmem:[#allocation2 + $0xe8] sm:$0x3] %vm31, 0.0
  %60 = vst.msk [vmem:[#allocation2 + $0xf0] sm:$0xff] %vm28, 0.0
  %61 = vst.msk [vmem:[#allocation2 + $0xf8] sm:$0xff] %vm28, 0.0
  %62 = vst.msk [vmem:[#allocation2 + $0x100] sm:$0x3] %vm31, 0.0
  %63 = vst.msk [vmem:[#allocation2 + $0x108] sm:$0xff] %vm28, 0.0
  %64 = vst.msk [vmem:[#allocation2 + $0x110] sm:$0xff] %vm28, 0.0
  %65 = vst.msk [vmem:[#allocation2 + $0x118] sm:$0x3] %vm31, 0.0
  %66 = vst.msk [vmem:[#allocation2 + $0x120] sm:$0xff] %vm28, 0.0
  %67 = vst.msk [vmem:[#allocation2 + $0x128] sm:$0xff] %vm28, 0.0
  %68 = vst.msk [vmem:[#allocation2 + $0x130] sm:$0x3] %vm31, 0.0
  %69 = vst.msk [vmem:[#allocation2 + $0x138] sm:$0xff] %vm28, 0.0
  %70 = vst.msk [vmem:[#allocation2 + $0x140] sm:$0xff] %vm28, 0.0
  %71 = vst.msk [vmem:[#allocation2 + $0x148] sm:$0x3] %vm31, 0.0
  %72 = vst.msk [vmem:[#allocation2 + $0x150] sm:$0xff] %vm28, 0.0
  %73 = vst.msk [vmem:[#allocation2 + $0x158] sm:$0xff] %vm28, 0.0
  %74 = vst.msk [vmem:[#allocation2 + $0x160] sm:$0x3] %vm31, 0.0
  %75 = vst.msk [vmem:[#allocation2 + $0x168] sm:$0xff] %vm28, 0.0
  %76 = vst.msk [vmem:[#allocation2 + $0x170] sm:$0xff] %vm28, 0.0
  %77 = vst.msk [vmem:[#allocation2 + $0x178] sm:$0x3] %vm31, 0.0
  %78 = vst.msk [vmem:[#allocation2 + $0x180] sm:$0xff] %vm28, 0.0
  %79 = vst.msk [vmem:[#allocation2 + $0x188] sm:$0xff] %vm28, 0.0
  %80 = vst.msk [vmem:[#allocation2 + $0x190] sm:$0x3] %vm31, 0.0
  %81 = vst.msk [vmem:[#allocation2 + $0x198] sm:$0xff] %vm28, 0.0
  %82 = vst.msk [vmem:[#allocation2 + $0x1a0] sm:$0xff] %vm28, 0.0
  %83 = vst.msk [vmem:[#allocation2 + $0x1a8] sm:$0x3] %vm31, 0.0
  %84 = vst.msk [vmem:[#allocation2 + $0x1b0] sm:$0xff] %vm28, 0.0
  %85 = vst.msk [vmem:[#allocation2 + $0x1b8] sm:$0xff] %vm28, 0.0
  %86 = vst.msk [vmem:[#allocation2 + $0x1c0] sm:$0x3] %vm31, 0.0
  %87 = vst.msk [vmem:[#allocation2 + $0x1c8] sm:$0xff] %vm28, 0.0
  %88 = vst.msk [vmem:[#allocation2 + $0x1d0] sm:$0xff] %vm28, 0.0
  %89 = vst.msk [vmem:[#allocation2 + $0x1d8] sm:$0x3] %vm31, 0.0
  %90 = vst.msk [vmem:[#allocation2 + $0x1e0] sm:$0xff] %vm28, 0.0
  %91 = vst.msk [vmem:[#allocation2 + $0x1e8] sm:$0xff] %vm28, 0.0
  %92 = vst.msk [vmem:[#allocation2 + $0x1f0] sm:$0x3] %vm31, 0.0
  %93 = vst.msk [vmem:[#allocation2 + $0x1f8] sm:$0xff] %vm28, 0.0
  %94 = vst.msk [vmem:[#allocation2 + $0x200] sm:$0xff] %vm28, 0.0
  %95 = vst.msk [vmem:[#allocation2 + $0x208] sm:$0x3] %vm31, 0.0
  %96 = vst.msk [vmem:[#allocation2 + $0x210] sm:$0xff] %vm28, 0.0
  %97 = vst.msk [vmem:[#allocation2 + $0x218] sm:$0xff] %vm28, 0.0
  %98 = vst.msk [vmem:[#allocation2 + $0x220] sm:$0x3] %vm31, 0.0
  %99 = vst.msk [vmem:[#allocation2 + $0x228] sm:$0xff] %vm28, 0.0
  %100 = vst.msk [vmem:[#allocation2 + $0x230] sm:$0xff] %vm28, 0.0
  %101 = vst.msk [vmem:[#allocation2 + $0x238] sm:$0x3] %vm31, 0.0
  %102 = vst.msk [vmem:[#allocation2 + $0x240] sm:$0xff] %vm28, 0.0
  %103 = vst.msk [vmem:[#allocation2 + $0x248] sm:$0xff] %vm28, 0.0
  %104 = vst.msk [vmem:[#allocation2 + $0x250] sm:$0x3] %vm31, 0.0
  %105 = vst.msk [vmem:[#allocation2 + $0x258] sm:$0xff] %vm28, 0.0
  %106 = vst.msk [vmem:[#allocation2 + $0x260] sm:$0xff] %vm28, 0.0
  %107 = vst.msk [vmem:[#allocation2 + $0x268] sm:$0x3] %vm31, 0.0
  %108 = vst.msk [vmem:[#allocation2 + $0x270] sm:$0xff] %vm28, 0.0
  %109 = vst.msk [vmem:[#allocation2 + $0x278] sm:$0xff] %vm28, 0.0
  %110 = vst.msk [vmem:[#allocation2 + $0x280] sm:$0x3] %vm31, 0.0
  %111 = vst.msk [vmem:[#allocation2 + $0x288] sm:$0xff] %vm28, 0.0
  %112 = vst.msk [vmem:[#allocation2 + $0x290] sm:$0xff] %vm28, 0.0
  %113 = vst.msk [vmem:[#allocation2 + $0x298] sm:$0x3] %vm31, 0.0
  %114 = vst.msk [vmem:[#allocation2 + $0x2a0] sm:$0xff] %vm28, 0.0
  %115 = vst.msk [vmem:[#allocation2 + $0x2a8] sm:$0xff] %vm28, 0.0
  %116 = vst.msk [vmem:[#allocation2 + $0x2b0] sm:$0x3] %vm31, 0.0
  %117 = vst.msk [vmem:[#allocation2 + $0x2b8] sm:$0xff] %vm28, 0.0
  %118 = vst.msk [vmem:[#allocation2 + $0x2c0] sm:$0xff] %vm28, 0.0
  %119 = vst.msk [vmem:[#allocation2 + $0x2c8] sm:$0x3] %vm31, 0.0
  %120 = vst.msk [vmem:[#allocation2 + $0x2d0] sm:$0xff] %vm28, 0.0
  %121 = vst.msk [vmem:[#allocation2 + $0x2d8] sm:$0xff] %vm28, 0.0
  %122 = vst.msk [vmem:[#allocation2 + $0x2e0] sm:$0x3] %vm31, 0.0
  %123 = vst.msk [vmem:[#allocation2 + $0x2e8] sm:$0xff] %vm28, 0.0
  %124 = vst.msk [vmem:[#allocation2 + $0x2f0] sm:$0xff] %vm28, 0.0
  %125 = vst.msk [vmem:[#allocation2 + $0x2f8] sm:$0x3] %vm31, 0.0
  %126 = vst.msk [vmem:[#allocation2 + $0x300] sm:$0xff] %vm28, 0.0
  %127 = vst.msk [vmem:[#allocation2 + $0x308] sm:$0xff] %vm28, 0.0
  %128 = vst.msk [vmem:[#allocation2 + $0x310] sm:$0x3] %vm31, 0.0
  %129 = vst.msk [vmem:[#allocation2 + $0x318] sm:$0xff] %vm28, 0.0
  %130 = vst.msk [vmem:[#allocation2 + $0x320] sm:$0xff] %vm28, 0.0
  %131 = vst.msk [vmem:[#allocation2 + $0x328] sm:$0x3] %vm31, 0.0
  %132 = vst.msk [vmem:[#allocation2 + $0x330] sm:$0xff] %vm28, 0.0
  %133 = vst.msk [vmem:[#allocation2 + $0x338] sm:$0xff] %vm28, 0.0
  %134 = vst.msk [vmem:[#allocation2 + $0x340] sm:$0x3] %vm31, 0.0
  %135 = vst.msk [vmem:[#allocation2 + $0x348] sm:$0xff] %vm28, 0.0
  %136 = vst.msk [vmem:[#allocation2 + $0x350] sm:$0xff] %vm28, 0.0
  %137 = vst.msk [vmem:[#allocation2 + $0x358] sm:$0x3] %vm31, 0.0
  %v138 = vld [vmem:[%s0] sm:$0xff]
  %v139 = vld [vmem:[%s0 + $0x8] sm:$0xff]
  %v140 = vld [vmem:[%s0 + $0x10] sm:$0xff]
  %v141 = vld [vmem:[%s0 + $0x18] sm:$0xff]
  %v142 = vld [vmem:[%s0 + $0x20] sm:$0xff]
  %v143 = vld [vmem:[%s0 + $0x28] sm:$0xff]
  %v144 = vld [vmem:[%s0 + $0x30] sm:$0xff]
  %v145 = vld [vmem:[%s0 + $0x38] sm:$0xff]
  %v146 = vld [vmem:[%s0 + $0x40] sm:$0xff]
  %v147 = vld [vmem:[%s0 + $0x48] sm:$0xff]
  %v148 = vld [vmem:[%s0 + $0x50] sm:$0xff]
  %v149 = vld [vmem:[%s0 + $0x58] sm:$0xff]
  %v150 = vld [vmem:[%s0 + $0x60] sm:$0xff]
  %v151 = vld [vmem:[%s0 + $0x68] sm:$0xff]
  %v152 = vld [vmem:[%s0 + $0x70] sm:$0xff]
  %v153 = vld [vmem:[%s0 + $0x78] sm:$0xff]
  %v154 = vld [vmem:[%s0 + $0x80] sm:$0xff]
  %v155 = vld [vmem:[%s0 + $0x88] sm:$0xff]
  %v156 = vld [vmem:[%s0 + $0x90] sm:$0xff]
  %v157 = vld [vmem:[%s0 + $0x98] sm:$0xff]
  %v158 = vld [vmem:[%s0 + $0xa0] sm:$0xff]
  %v159 = vld [vmem:[%s0 + $0xa8] sm:$0xff]
  %v160 = vld [vmem:[%s0 + $0xb0] sm:$0xff]
  %v161 = vld [vmem:[%s0 + $0xb8] sm:$0xff]
  %v162 = vld [vmem:[%s0 + $0xc0] sm:$0xff]
  %v163 = vld [vmem:[%s0 + $0xc8] sm:$0xff]
  %v164 = vld [vmem:[%s0 + $0xd0] sm:$0xff]
  %v165 = vld [vmem:[%s0 + $0xd8] sm:$0xff]
  %v166 = vld [vmem:[%s0 + $0xe0] sm:$0xff]
  %v167 = vld [vmem:[%s0 + $0xe8] sm:$0xff]
  %v168 = vld [vmem:[%s0 + $0xf0] sm:$0xff]
  %v169 = vld [vmem:[%s0 + $0xf8] sm:$0xff]
  %v170 = vld [vmem:[%s0 + $0x100] sm:$0xff]
  %v171 = vld [vmem:[%s0 + $0x108] sm:$0xff]
  %v172 = vld [vmem:[%s0 + $0x110] sm:$0xff]
  %v173 = vld [vmem:[%s0 + $0x118] sm:$0xff]
  %v174 = vld [vmem:[%s0 + $0x120] sm:$0xff]
  %v175 = vld [vmem:[%s0 + $0x128] sm:$0xff]
  %v176 = vld [vmem:[%s0 + $0x130] sm:$0xff]
  %v177 = vld [vmem:[%s0 + $0x138] sm:$0xff]
  %v178 = vld [vmem:[%s0 + $0x140] sm:$0xff]
  %v179 = vld [vmem:[%s0 + $0x148] sm:$0xff]
  %v180 = vld [vmem:[%s0 + $0x150] sm:$0xff]
  %v181 = vld [vmem:[%s0 + $0x158] sm:$0xff]
  %v182 = vld [vmem:[%s0 + $0x160] sm:$0xff]
  %v183 = vld [vmem:[%s0 + $0x168] sm:$0xff]
  %v184 = vld [vmem:[%s0 + $0x170] sm:$0xff]
  %v185 = vld [vmem:[%s0 + $0x178] sm:$0xff]
  %v186 = vld [vmem:[%s0 + $0x180] sm:$0xff]
  %v187 = vld [vmem:[%s0 + $0x188] sm:$0xff]
  %v188 = vld [vmem:[%s0 + $0x190] sm:$0xff]
  %v189 = vld [vmem:[%s0 + $0x198] sm:$0xff]
  %v190 = vld [vmem:[%s0 + $0x1a0] sm:$0xff]
  %v191 = vld [vmem:[%s0 + $0x1a8] sm:$0xff]
  %v192 = vld [vmem:[%s0 + $0x1b0] sm:$0xff]
  %v193 = vld [vmem:[%s0 + $0x1b8] sm:$0xff]
  %v194 = vld [vmem:[%s0 + $0x1c0] sm:$0xff]
  %v195 = vld [vmem:[%s0 + $0x1c8] sm:$0xff]
  %v196 = vld [vmem:[%s0 + $0x1d0] sm:$0xff]
  %v197 = vld [vmem:[%s0 + $0x1d8] sm:$0xff]
  %v198 = vld [vmem:[%s0 + $0x1e0] sm:$0xff]
  %v199 = vld [vmem:[%s0 + $0x1e8] sm:$0xff]
  %v200 = vld [vmem:[%s0 + $0x1f0] sm:$0xff]
  %v201 = vld [vmem:[%s0 + $0x1f8] sm:$0xff]
  %s202 = scalar_lea.vmem [#allocation2], 24
  %203 = vst.msk [vmem:[%s202 + $0x1] sm:$0xff] %vm28, %v138
  %204 = vst.msk [vmem:[%s202 + $0x9] sm:$0xff] %vm28, %v139
  %205 = vst.msk [vmem:[%s202 + $0x19] sm:$0xff] %vm28, %v140
  %206 = vst.msk [vmem:[%s202 + $0x21] sm:$0xff] %vm28, %v141
  %207 = vst.msk [vmem:[%s202 + $0x31] sm:$0xff] %vm28, %v142
  %208 = vst.msk [vmem:[%s202 + $0x39] sm:$0xff] %vm28, %v143
  %209 = vst.msk [vmem:[%s202 + $0x49] sm:$0xff] %vm28, %v144
  %210 = vst.msk [vmem:[%s202 + $0x51] sm:$0xff] %vm28, %v145
  %211 = vst.msk [vmem:[%s202 + $0x61] sm:$0xff] %vm28, %v146
  %212 = vst.msk [vmem:[%s202 + $0x69] sm:$0xff] %vm28, %v147
  %213 = vst.msk [vmem:[%s202 + $0x79] sm:$0xff] %vm28, %v148
  %214 = vst.msk [vmem:[%s202 + $0x81] sm:$0xff] %vm28, %v149
  %215 = vst.msk [vmem:[%s202 + $0x91] sm:$0xff] %vm28, %v150
  %216 = vst.msk [vmem:[%s202 + $0x99] sm:$0xff] %vm28, %v151
  %217 = vst.msk [vmem:[%s202 + $0xa9] sm:$0xff] %vm28, %v152
  %218 = vst.msk [vmem:[%s202 + $0xb1] sm:$0xff] %vm28, %v153
  %219 = vst.msk [vmem:[%s202 + $0xc1] sm:$0xff] %vm28, %v154
  %220 = vst.msk [vmem:[%s202 + $0xc9] sm:$0xff] %vm28, %v155
  %221 = vst.msk [vmem:[%s202 + $0xd9] sm:$0xff] %vm28, %v156
  %222 = vst.msk [vmem:[%s202 + $0xe1] sm:$0xff] %vm28, %v157
  %223 = vst.msk [vmem:[%s202 + $0xf1] sm:$0xff] %vm28, %v158
  %224 = vst.msk [vmem:[%s202 + $0xf9] sm:$0xff] %vm28, %v159
  %225 = vst.msk [vmem:[%s202 + $0x109] sm:$0xff] %vm28, %v160
  %226 = vst.msk [vmem:[%s202 + $0x111] sm:$0xff] %vm28, %v161
  %227 = vst.msk [vmem:[%s202 + $0x121] sm:$0xff] %vm28, %v162
  %228 = vst.msk [vmem:[%s202 + $0x129] sm:$0xff] %vm28, %v163
  %229 = vst.msk [vmem:[%s202 + $0x139] sm:$0xff] %vm28, %v164
  %230 = vst.msk [vmem:[%s202 + $0x141] sm:$0xff] %vm28, %v165
  %231 = vst.msk [vmem:[%s202 + $0x151] sm:$0xff] %vm28, %v166
  %232 = vst.msk [vmem:[%s202 + $0x159] sm:$0xff] %vm28, %v167
  %233 = vst.msk [vmem:[%s202 + $0x169] sm:$0xff] %vm28, %v168
  %234 = vst.msk [vmem:[%s202 + $0x171] sm:$0xff] %vm28, %v169
  %235 = vst.msk [vmem:[%s202 + $0x1b1] sm:$0xff] %vm28, %v170
  %236 = vst.msk [vmem:[%s202 + $0x1b9] sm:$0xff] %vm28, %v171
  %237 = vst.msk [vmem:[%s202 + $0x1c9] sm:$0xff] %vm28, %v172
  %238 = vst.msk [vmem:[%s202 + $0x1d1] sm:$0xff] %vm28, %v173
  %239 = vst.msk [vmem:[%s202 + $0x1e1] sm:$0xff] %vm28, %v174
  %240 = vst.msk [vmem:[%s202 + $0x1e9] sm:$0xff] %vm28, %v175
  %241 = vst.msk [vmem:[%s202 + $0x1f9] sm:$0xff] %vm28, %v176
  %242 = vst.msk [vmem:[%s202 + $0x201] sm:$0xff] %vm28, %v177
  %243 = vst.msk [vmem:[%s202 + $0x211] sm:$0xff] %vm28, %v178
  %244 = vst.msk [vmem:[%s202 + $0x219] sm:$0xff] %vm28, %v179
  %245 = vst.msk [vmem:[%s202 + $0x229] sm:$0xff] %vm28, %v180
  %246 = vst.msk [vmem:[%s202 + $0x231] sm:$0xff] %vm28, %v181
  %247 = vst.msk [vmem:[%s202 + $0x241] sm:$0xff] %vm28, %v182
  %248 = vst.msk [vmem:[%s202 + $0x249] sm:$0xff] %vm28, %v183
  %249 = vst.msk [vmem:[%s202 + $0x259] sm:$0xff] %vm28, %v184
  %250 = vst.msk [vmem:[%s202 + $0x261] sm:$0xff] %vm28, %v185
  %251 = vst.msk [vmem:[%s202 + $0x271] sm:$0xff] %vm28, %v186
  %252 = vst.msk [vmem:[%s202 + $0x279] sm:$0xff] %vm28, %v187
  %253 = vst.msk [vmem:[%s202 + $0x289] sm:$0xff] %vm28, %v188
  %254 = vst.msk [vmem:[%s202 + $0x291] sm:$0xff] %vm28, %v189
  %255 = vst.msk [vmem:[%s202 + $0x2a1] sm:$0xff] %vm28, %v190
  %256 = vst.msk [vmem:[%s202 + $0x2a9] sm:$0xff] %vm28, %v191
  %257 = vst.msk [vmem:[%s202 + $0x2b9] sm:$0xff] %vm28, %v192
  %258 = vst.msk [vmem:[%s202 + $0x2c1] sm:$0xff] %vm28, %v193
  %259 = vst.msk [vmem:[%s202 + $0x2d1] sm:$0xff] %vm28, %v194
  %260 = vst.msk [vmem:[%s202 + $0x2d9] sm:$0xff] %vm28, %v195
  %261 = vst.msk [vmem:[%s202 + $0x2e9] sm:$0xff] %vm28, %v196
  %262 = vst.msk [vmem:[%s202 + $0x2f1] sm:$0xff] %vm28, %v197
  %263 = vst.msk [vmem:[%s202 + $0x301] sm:$0xff] %vm28, %v198
  %264 = vst.msk [vmem:[%s202 + $0x309] sm:$0xff] %vm28, %v199
  %265 = vst.msk [vmem:[%s202 + $0x319] sm:$0xff] %vm28, %v200
  %266 = vst.msk [vmem:[%s202 + $0x321] sm:$0xff] %vm28, %v201
  %v267 = vld [vmem:[%s3] sm:$0x1]
  %v268 = vld [vmem:[%s4] sm:$0x1]
  %v269 = vld [vmem:[#allocation2] sm:$0xff]
  %v270 = vld [vmem:[#allocation2 + $0x8] sm:$0xff]
  %v271 = vld [vmem:[#allocation2 + $0x18] sm:$0xff]
  %v272 = vld [vmem:[#allocation2 + $0x20] sm:$0xff]
  %v273 = vld [vmem:[#allocation2 + $0x30] sm:$0xff]
  %v274 = vld [vmem:[#allocation2 + $0x38] sm:$0xff]
  %v275 = vld [vmem:[#allocation2 + $0x48] sm:$0xff]
  %v276 = vld [vmem:[#allocation2 + $0x50] sm:$0xff]
  %v277 = vld [vmem:[#allocation2 + $0x60] sm:$0xff]
  %v278 = vld [vmem:[#allocation2 + $0x68] sm:$0xff]
  %v279 = vld [vmem:[#allocation2 + $0x78] sm:$0xff]
  %v280 = vld [vmem:[#allocation2 + $0x80] sm:$0xff]
  %v281 = vld [vmem:[#allocation2 + $0x90] sm:$0xff]
  %v282 = vld [vmem:[#allocation2 + $0x98] sm:$0xff]
  %v283 = vld [vmem:[#allocation2 + $0xa8] sm:$0xff]
  %v284 = vld [vmem:[#allocation2 + $0xb0] sm:$0xff]
  %v285 = vld [vmem:[#allocation2 + $0xc0] sm:$0xff]
  %v286 = vld [vmem:[#allocation2 + $0xc8] sm:$0xff]
  %v287 = vld [vmem:[#allocation2 + $0xd8] sm:$0xff]
  %v288 = vld [vmem:[#allocation2 + $0xe0] sm:$0xff]
  %v289 = vld [vmem:[#allocation2 + $0xf0] sm:$0xff]
  %v290 = vld [vmem:[#allocation2 + $0xf8] sm:$0xff]
  %v291 = vld [vmem:[#allocation2 + $0x108] sm:$0xff]
  %v292 = vld [vmem:[#allocation2 + $0x110] sm:$0xff]
  %v293 = vld [vmem:[#allocation2 + $0x120] sm:$0xff]
  %v294 = vld [vmem:[#allocation2 + $0x128] sm:$0xff]
  %v295 = vld [vmem:[#allocation2 + $0x138] sm:$0xff]
  %v296 = vld [vmem:[#allocation2 + $0x140] sm:$0xff]
  %v297 = vld [vmem:[#allocation2 + $0x150] sm:$0xff]
  %v298 = vld [vmem:[#allocation2 + $0x158] sm:$0xff]
  %v299 = vld [vmem:[#allocation2 + $0x168] sm:$0xff]
  %v300 = vld [vmem:[#allocation2 + $0x170] sm:$0xff]
  %v301 = vld [vmem:[#allocation2 + $0x1b0] sm:$0xff]
  %v302 = vld [vmem:[#allocation2 + $0x1b8] sm:$0xff]
  %v303 = vld [vmem:[#allocation2 + $0x1c8] sm:$0xff]
  %v304 = vld [vmem:[#allocation2 + $0x1d0] sm:$0xff]
  %v305 = vld [vmem:[#allocation2 + $0x1e0] sm:$0xff]
  %v306 = vld [vmem:[#allocation2 + $0x1e8] sm:$0xff]
  %v307 = vld [vmem:[#allocation2 + $0x1f8] sm:$0xff]
  %v308 = vld [vmem:[#allocation2 + $0x200] sm:$0xff]
  %v309 = vld [vmem:[#allocation2 + $0x210] sm:$0xff]
  %v310 = vld [vmem:[#allocation2 + $0x218] sm:$0xff]
  %v311 = vld [vmem:[#allocation2 + $0x228] sm:$0xff]
  %v312 = vld [vmem:[#allocation2 + $0x230] sm:$0xff]
  %v313 = vld [vmem:[#allocation2 + $0x240] sm:$0xff]
  %v314 = vld [vmem:[#allocation2 + $0x248] sm:$0xff]
  %v315 = vld [vmem:[#allocation2 + $0x258] sm:$0xff]
  %v316 = vld [vmem:[#allocation2 + $0x260] sm:$0xff]
  %v317 = vld [vmem:[#allocation2 + $0x270] sm:$0xff]
  %v318 = vld [vmem:[#allocation2 + $0x278] sm:$0xff]
  %v319 = vld [vmem:[#allocation2 + $0x288] sm:$0xff]
  %v320 = vld [vmem:[#allocation2 + $0x290] sm:$0xff]
  %v321 = vld [vmem:[#allocation2 + $0x2a0] sm:$0xff]
  %v322 = vld [vmem:[#allocation2 + $0x2a8] sm:$0xff]
  %v323 = vld [vmem:[#allocation2 + $0x2b8] sm:$0xff]
  %v324 = vld [vmem:[#allocation2 + $0x2c0] sm:$0xff]
  %v325 = vld [vmem:[#allocation2 + $0x2d0] sm:$0xff]
  %v326 = vld [vmem:[#allocation2 + $0x2d8] sm:$0xff]
  %v327 = vld [vmem:[#allocation2 + $0x2e8] sm:$0xff]
  %v328 = vld [vmem:[#allocation2 + $0x2f0] sm:$0xff]
  %v329 = vld [vmem:[#allocation2 + $0x300] sm:$0xff]
  %v330 = vld [vmem:[#allocation2 + $0x308] sm:$0xff]
  %v331 = vld [vmem:[#allocation2 + $0x318] sm:$0xff]
  %v332 = vld [vmem:[#allocation2 + $0x320] sm:$0xff]
  %v333 = vld [vmem:[%s1] sm:$0xff]
  %v334 = vld [vmem:[#allocation2 + $0x1] sm:$0xff]
  %v335 = vld [vmem:[#allocation2 + $0x9] sm:$0xff]
  %v336 = vld [vmem:[#allocation2 + $0x19] sm:$0xff]
  %v337 = vld [vmem:[#allocation2 + $0x21] sm:$0xff]
  %v338 = vld [vmem:[#allocation2 + $0x31] sm:$0xff]
  %v339 = vld [vmem:[#allocation2 + $0x39] sm:$0xff]
  %v340 = vld [vmem:[#allocation2 + $0x49] sm:$0xff]
  %v341 = vld [vmem:[#allocation2 + $0x51] sm:$0xff]
  %v342 = vld [vmem:[#allocation2 + $0x61] sm:$0xff]
  %v343 = vld [vmem:[#allocation2 + $0x69] sm:$0xff]
  %v344 = vld [vmem:[#allocation2 + $0x79] sm:$0xff]
  %v345 = vld [vmem:[#allocation2 + $0x81] sm:$0xff]
  %v346 = vld [vmem:[#allocation2 + $0x91] sm:$0xff]
  %v347 = vld [vmem:[#allocation2 + $0x99] sm:$0xff]
  %v348 = vld [vmem:[#allocation2 + $0xa9] sm:$0xff]
  %v349 = vld [vmem:[#allocation2 + $0xb1] sm:$0xff]
  %v350 = vld [vmem:[#allocation2 + $0xc1] sm:$0xff]
  %v351 = vld [vmem:[#allocation2 + $0xc9] sm:$0xff]
  %v352 = vld [vmem:[#allocation2 + $0xd9] sm:$0xff]
  %v353 = vld [vmem:[#allocation2 + $0xe1] sm:$0xff]
  %v354 = vld [vmem:[#allocation2 + $0xf1] sm:$0xff]
  %v355 = vld [vmem:[#allocation2 + $0xf9] sm:$0xff]
  %v356 = vld [vmem:[#allocation2 + $0x109] sm:$0xff]
  %v357 = vld [vmem:[#allocation2 + $0x111] sm:$0xff]
  %v358 = vld [vmem:[#allocation2 + $0x121] sm:$0xff]
  %v359 = vld [vmem:[#allocation2 + $0x129] sm:$0xff]
  %v360 = vld [vmem:[#allocation2 + $0x139] sm:$0xff]
  %v361 = vld [vmem:[#allocation2 + $0x141] sm:$0xff]
  %v362 = vld [vmem:[#allocation2 + $0x151] sm:$0xff]
  %v363 = vld [vmem:[#allocation2 + $0x159] sm:$0xff]
  %v364 = vld [vmem:[#allocation2 + $0x169] sm:$0xff]
  %v365 = vld [vmem:[#allocation2 + $0x171] sm:$0xff]
  %v366 = vld [vmem:[#allocation2 + $0x1b1] sm:$0xff]
  %v367 = vld [vmem:[#allocation2 + $0x1b9] sm:$0xff]
  %v368 = vld [vmem:[#allocation2 + $0x1c9] sm:$0xff]
  %v369 = vld [vmem:[#allocation2 + $0x1d1] sm:$0xff]
  %v370 = vld [vmem:[#allocation2 + $0x1e1] sm:$0xff]
  %v371 = vld [vmem:[#allocation2 + $0x1e9] sm:$0xff]
  %v372 = vld [vmem:[#allocation2 + $0x1f9] sm:$0xff]
  %v373 = vld [vmem:[#allocation2 + $0x201] sm:$0xff]
  %v374 = vld [vmem:[#allocation2 + $0x211] sm:$0xff]
  %v375 = vld [vmem:[#allocation2 + $0x219] sm:$0xff]
  %v376 = vld [vmem:[#allocation2 + $0x229] sm:$0xff]
  %v377 = vld [vmem:[#allocation2 + $0x231] sm:$0xff]
  %v378 = vld [vmem:[#allocation2 + $0x241] sm:$0xff]
  %v379 = vld [vmem:[#allocation2 + $0x249] sm:$0xff]
  %v380 = vld [vmem:[#allocation2 + $0x259] sm:$0xff]
  %v381 = vld [vmem:[#allocation2 + $0x261] sm:$0xff]
  %v382 = vld [vmem:[#allocation2 + $0x271] sm:$0xff]
  %v383 = vld [vmem:[#allocation2 + $0x279] sm:$0xff]
  %v384 = vld [vmem:[#allocation2 + $0x289] sm:$0xff]
  %v385 = vld [vmem:[#allocation2 + $0x291] sm:$0xff]
  %v386 = vld [vmem:[#allocation2 + $0x2a1] sm:$0xff]
  %v387 = vld [vmem:[#allocation2 + $0x2a9] sm:$0xff]
  %v388 = vld [vmem:[#allocation2 + $0x2b9] sm:$0xff]
  %v389 = vld [vmem:[#allocation2 + $0x2c1] sm:$0xff]
  %v390 = vld [vmem:[#allocation2 + $0x2d1] sm:$0xff]
  %v391 = vld [vmem:[#allocation2 + $0x2d9] sm:$0xff]
  %v392 = vld [vmem:[#allocation2 + $0x2e9] sm:$0xff]
  %v393 = vld [vmem:[#allocation2 + $0x2f1] sm:$0xff]
  %v394 = vld [vmem:[#allocation2 + $0x301] sm:$0xff]
  %v395 = vld [vmem:[#allocation2 + $0x309] sm:$0xff]
  %v396 = vld [vmem:[#allocation2 + $0x319] sm:$0xff]
  %v397 = vld [vmem:[#allocation2 + $0x321] sm:$0xff]
  %v398 = vld [vmem:[%s1 + $0x8] sm:$0xff]
  %v400 = vsel %vm28, %v334, 0
  %v403 = vsel %vm28, %v335, 0
  %v406 = vsel %vm28, %v336, 0
  %v409 = vsel %vm28, %v337, 0
  %v412 = vsel %vm28, %v338, 0
  %v415 = vsel %vm28, %v339, 0
  %v418 = vsel %vm28, %v340, 0
  %v421 = vsel %vm28, %v341, 0
  %v424 = vsel %vm28, %v342, 0
  %v427 = vsel %vm28, %v343, 0
  %v430 = vsel %vm28, %v344, 0
  %v433 = vsel %vm28, %v345, 0
  %v436 = vsel %vm28, %v346, 0
  %v439 = vsel %vm28, %v347, 0
  %v442 = vsel %vm28, %v348, 0
  %v445 = vsel %vm28, %v349, 0
  %v448 = vsel %vm28, %v350, 0
  %v451 = vsel %vm28, %v351, 0
  %v454 = vsel %vm28, %v352, 0
  %v457 = vsel %vm28, %v353, 0
  %v460 = vsel %vm28, %v354, 0
  %v463 = vsel %vm28, %v355, 0
  %v466 = vsel %vm28, %v356, 0
  %v469 = vsel %vm28, %v357, 0
  %v472 = vsel %vm28, %v358, 0
  %v475 = vsel %vm28, %v359, 0
  %v478 = vsel %vm28, %v360, 0
  %v481 = vsel %vm28, %v361, 0
  %v484 = vsel %vm28, %v362, 0
  %v487 = vsel %vm28, %v363, 0
  %v490 = vsel %vm28, %v364, 0
  %v493 = vsel %vm28, %v365, 0
  %v496 = vsel %vm28, %v366, 0
  %v499 = vsel %vm28, %v367, 0
  %v502 = vsel %vm28, %v368, 0
  %v505 = vsel %vm28, %v369, 0
  %v508 = vsel %vm28, %v370, 0
  %v511 = vsel %vm28, %v371, 0
  %v514 = vsel %vm28, %v372, 0
  %v517 = vsel %vm28, %v373, 0
  %v520 = vsel %vm28, %v374, 0
  %v523 = vsel %vm28, %v375, 0
  %v526 = vsel %vm28, %v376, 0
  %v529 = vsel %vm28, %v377, 0
  %v532 = vsel %vm28, %v378, 0
  %v535 = vsel %vm28, %v379, 0
  %v538 = vsel %vm28, %v380, 0
  %v541 = vsel %vm28, %v381, 0
  %v544 = vsel %vm28, %v382, 0
  %v547 = vsel %vm28, %v383, 0
  %v550 = vsel %vm28, %v384, 0
  %v553 = vsel %vm28, %v385, 0
  %v556 = vsel %vm28, %v386, 0
  %v559 = vsel %vm28, %v387, 0
  %v562 = vsel %vm28, %v388, 0
  %v565 = vsel %vm28, %v389, 0
  %v568 = vsel %vm28, %v390, 0
  %v571 = vsel %vm28, %v391, 0
  %v574 = vsel %vm28, %v392, 0
  %v577 = vsel %vm28, %v393, 0
  %v580 = vsel %vm28, %v394, 0
  %v583 = vsel %vm28, %v395, 0
  %v586 = vsel %vm28, %v396, 0
  %v589 = vsel %vm28, %v397, 0
  %591 = vmatprep.subr.mxu0 0.0
  %592 = vmatpush1.msra.mxu0 %v398
  %593 = vmatprep.subr.mxu0 0.0
  %594 = vmatpush1.msra.mxu0 0.0
  %595 = vmatprep.subr.mxu0 0.0
  %596 = vmatpush1.msra.mxu0 0.0
  %597 = vmatprep.subr.mxu0 0.0
  %598 = vmatpush1.msra.mxu0 0.0
  %599 = vmatprep.subr.mxu0 0.0
  %600 = vmatpush1.msra.mxu0 0.0
  %601 = vmatprep.subr.mxu0 0.0
  %602 = vmatpush1.msra.mxu0 0.0
  %603 = vmatprep.subr.mxu0 0.0
  %604 = vmatpush1.msra.mxu0 0.0
  %605 = vmatprep.subr.mxu0 0.0
  %606 = vmatpush1.msra.mxu0 0.0
  %607 = vmatprep.subr.mxu0 0.0
  %608 = vmatpush1.msra.mxu0 0.0
  %609 = vmatprep.subr.mxu0 0.0
  %610 = vmatpush1.msra.mxu0 0.0
  %611 = vmatprep.subr.mxu0 0.0
  %612 = vmatpush1.msra.mxu0 0.0
  %613 = vmatprep.subr.mxu0 0.0
  %614 = vmatpush1.msra.mxu0 0.0
  %615 = vmatprep.subr.mxu0 0.0
  %616 = vmatpush1.msra.mxu0 0.0
  %617 = vmatprep.subr.mxu0 0.0
  %618 = vmatpush1.msra.mxu0 0.0
  %619 = vmatprep.subr.mxu0 0.0
  %620 = vmatpush1.msra.mxu0 0.0
  %621 = vmatprep.subr.mxu0 0.0
  %622 = vmatpush1.msra.mxu0 0.0
  %623 = vmatprep.subr.mxu0 0.0
  %624 = vmatpush1.msra.mxu0 0.0
  %625 = vmatprep.subr.mxu0 0.0
  %626 = vmatpush1.msra.mxu0 0.0
  %627 = vmatprep.subr.mxu0 0.0
  %628 = vmatpush1.msra.mxu0 0.0
  %629 = vmatprep.subr.mxu0 0.0
  %630 = vmatpush1.msra.mxu0 0.0
  %631 = vmatprep.subr.mxu0 0.0
  %632 = vmatpush1.msra.mxu0 0.0
  %633 = vmatprep.subr.mxu0 0.0
  %634 = vmatpush1.msra.mxu0 0.0
  %635 = vmatprep.subr.mxu0 0.0
  %636 = vmatpush1.msra.mxu0 0.0
  %637 = vmatprep.subr.mxu0 0.0
  %638 = vmatpush1.msra.mxu0 0.0
  %639 = vmatprep.subr.mxu0 0.0
  %640 = vmatpush1.msra.mxu0 0.0
  %641 = vmatprep.subr.mxu0 0.0
  %642 = vmatpush1.msra.mxu0 0.0
  %643 = vmatprep.subr.mxu0 0.0
  %644 = vmatpush1.msra.mxu0 0.0
  %645 = vmatprep.subr.mxu0 0.0
  %646 = vmatpush1.msra.mxu0 0.0
  %647 = vmatprep.subr.mxu0 0.0
  %648 = vmatpush1.msra.mxu0 0.0
  %649 = vmatprep.subr.mxu0 0.0
  %650 = vmatpush1.msra.mxu0 0.0
  %651 = vmatprep.subr.mxu0 0.0
  %652 = vmatpush1.msra.mxu0 0.0
  %653 = vmatprep.subr.mxu0 0.0
  %654 = vmatpush1.msra.mxu0 0.0
  %655 = vmatprep.mubr.f32.mxu0 0.0
  %656 = vmatmul.mubr.f32.gmra.mrb[0].mxu0 %v400
  %v657 = vpop.f32.mrb[0].mxu0
  %v658 = vadd.f32 0.0, %v657
  %v659 = vpop.f32.mrb[0].mxu0
  %660 = vmatprep.mubr.f32.mxu0 0.0
  %661 = vmatmul.mubr.f32.gmra.mrb[0].mxu0 %v403
  %v662 = vpop.f32.mrb[0].mxu0
  %v663 = vadd.f32 0.0, %v662
  %v664 = vpop.f32.mrb[0].mxu0
  %665 = vmatprep.mubr.f32.mxu0 0.0
  %666 = vmatmul.mubr.f32.gmra.mrb[0].mxu0 %v406
  %v667 = vpop.f32.mrb[0].mxu0
  %v668 = vadd.f32 0.0, %v667
  %v669 = vpop.f32.mrb[0].mxu0
  %670 = vmatprep.mubr.f32.mxu0 0.0
  %671 = vmatmul.mubr.f32.gmra.mrb[0].mxu0 %v409
  %v672 = vpop.f32.mrb[0].mxu0
  %v673 = vadd.f32 0.0, %v672
  %v674 = vpop.f32.mrb[0].mxu0
  %675 = vmatprep.mubr.f32.mxu0 0.0
  %676 = vmatmul.mubr.f32.gmra.mrb[0].mxu0 %v412
  %v677 = vpop.f32.mrb[0].mxu0
  %v678 = vadd.f32 0.0, %v677
  %v679 = vpop.f32.mrb[0].mxu0
  %680 = vmatprep.mubr.f32.mxu0 0.0
  %681 = vmatmul.mubr.f32.gmra.mrb[0].mxu0 %v415
  %v682 = vpop.f32.mrb[0].mxu0
  %v683 = vadd.f32 0.0, %v682
  %v684 = vpop.f32.mrb[0].mxu0
  %685 = vmatprep.mubr.f32.mxu0 0.0
  %686 = vmatmul.mubr.f32.gmra.mrb[0].mxu0 %v418
  %v687 = vpop.f32.mrb[0].mxu0
  %v688 = vadd.f32 0.0, %v687
  %v689 = vpop.f32.mrb[0].mxu0
  %690 = vmatprep.mubr.f32.mxu0 0.0
  %691 = vmatmul.mubr.f32.gmra.mrb[0].mxu0 %v421
  %v692 = vpop.f32.mrb[0].mxu0
  %v693 = vadd.f32 0.0, %v692
  %v694 = vpop.f32.mrb[0].mxu0
  %695 = vmatprep.mubr.f32.mxu0 0.0
  %696 = vmatmul.mubr.f32.gmra.mrb[0].mxu0 %v424
  %v697 = vpop.f32.mrb[0].mxu0
  %v698 = vadd.f32 0.0, %v697
  %v699 = vpop.f32.mrb[0].mxu0
  %700 = vmatprep.mubr.f32.mxu0 0.0
  %701 = vmatmul.mubr.f32.gmra.mrb[0].mxu0 %v427
  %v702 = vpop.f32.mrb[0].mxu0
  %v703 = vadd.f32 0.0, %v702
  %v704 = vpop.f32.mrb[0].mxu0
  %705 = vmatprep.mubr.f32.mxu0 0.0
  %706 = vmatmul.mubr.f32.gmra.mrb[0].mxu0 %v430
  %v707 = vpop.f32.mrb[0].mxu0
  %v708 = vadd.f32 0.0, %v707
  %v709 = vpop.f32.mrb[0].mxu0
  %710 = vmatprep.mubr.f32.mxu0 0.0
  %711 = vmatmul.mubr.f32.gmra.mrb[0].mxu0 %v433
  %v712 = vpop.f32.mrb[0].mxu0
  %v713 = vadd.f32 0.0, %v712
  %v714 = vpop.f32.mrb[0].mxu0
  %715 = vmatprep.mubr.f32.mxu0 0.0
  %716 = vmatmul.mubr.f32.gmra.mrb[0].mxu0 %v436
  %v717 = vpop.f32.mrb[0].mxu0
  %v718 = vadd.f32 0.0, %v717
  %v719 = vpop.f32.mrb[0].mxu0
  %720 = vmatprep.mubr.f32.mxu0 0.0
  %721 = vmatmul.mubr.f32.gmra.mrb[0].mxu0 %v439
  %v722 = vpop.f32.mrb[0].mxu0
  %v723 = vadd.f32 0.0, %v722
  %v724 = vpop.f32.mrb[0].mxu0
  %725 = vmatprep.mubr.f32.mxu0 0.0
  %726 = vmatmul.mubr.f32.gmra.mrb[0].mxu0 %v442
  %v727 = vpop.f32.mrb[0].mxu0
  %v728 = vadd.f32 0.0, %v727
  %v729 = vpop.f32.mrb[0].mxu0
  %730 = vmatprep.mubr.f32.mxu0 0.0
  %731 = vmatmul.mubr.f32.gmra.mrb[0].mxu0 %v445
  %v732 = vpop.f32.mrb[0].mxu0
  %v733 = vadd.f32 0.0, %v732
  %v734 = vpop.f32.mrb[0].mxu0
  %735 = vmatprep.mubr.f32.mxu0 0.0
  %736 = vmatmul.mubr.f32.gmra.mrb[0].mxu0 %v448
  %v737 = vpop.f32.mrb[0].mxu0
  %v738 = vadd.f32 0.0, %v737
  %v739 = vpop.f32.mrb[0].mxu0
  %740 = vmatprep.mubr.f32.mxu0 0.0
  %741 = vmatmul.mubr.f32.gmra.mrb[0].mxu0 %v451
  %v742 = vpop.f32.mrb[0].mxu0
  %v743 = vadd.f32 0.0, %v742
  %v744 = vpop.f32.mrb[0].mxu0
  %745 = vmatprep.mubr.f32.mxu0 0.0
  %746 = vmatmul.mubr.f32.gmra.mrb[0].mxu0 %v454
  %v747 = vpop.f32.mrb[0].mxu0
  %v748 = vadd.f32 0.0, %v747
  %v749 = vpop.f32.mrb[0].mxu0
  %750 = vmatprep.mubr.f32.mxu0 0.0
  %751 = vmatmul.mubr.f32.gmra.mrb[0].mxu0 %v457
  %v752 = vpop.f32.mrb[0].mxu0
  %v753 = vadd.f32 0.0, %v752
  %v754 = vpop.f32.mrb[0].mxu0
  %755 = vmatprep.mubr.f32.mxu0 0.0
  %756 = vmatmul.mubr.f32.gmra.mrb[0].mxu0 %v460
  %v757 = vpop.f32.mrb[0].mxu0
  %v758 = vadd.f32 0.0, %v757
  %v759 = vpop.f32.mrb[0].mxu0
  %760 = vmatprep.mubr.f32.mxu0 0.0
  %761 = vmatmul.mubr.f32.gmra.mrb[0].mxu0 %v463
  %v762 = vpop.f32.mrb[0].mxu0
  %v763 = vadd.f32 0.0, %v762
  %v764 = vpop.f32.mrb[0].mxu0
  %765 = vmatprep.mubr.f32.mxu0 0.0
  %766 = vmatmul.mubr.f32.gmra.mrb[0].mxu0 %v466
  %v767 = vpop.f32.mrb[0].mxu0
  %v768 = vadd.f32 0.0, %v767
  %v769 = vpop.f32.mrb[0].mxu0
  %770 = vmatprep.mubr.f32.mxu0 0.0
  %771 = vmatmul.mubr.f32.gmra.mrb[0].mxu0 %v469
  %v772 = vpop.f32.mrb[0].mxu0
  %v773 = vadd.f32 0.0, %v772
  %v774 = vpop.f32.mrb[0].mxu0
  %775 = vmatprep.mubr.f32.mxu0 0.0
  %776 = vmatmul.mubr.f32.gmra.mrb[0].mxu0 %v472
  %v777 = vpop.f32.mrb[0].mxu0
  %v778 = vadd.f32 0.0, %v777
  %v779 = vpop.f32.mrb[0].mxu0
  %780 = vmatprep.mubr.f32.mxu0 0.0
  %781 = vmatmul.mubr.f32.gmra.mrb[0].mxu0 %v475
  %v782 = vpop.f32.mrb[0].mxu0
  %v783 = vadd.f32 0.0, %v782
  %v784 = vpop.f32.mrb[0].mxu0
  %785 = vmatprep.mubr.f32.mxu0 0.0
  %786 = vmatmul.mubr.f32.gmra.mrb[0].mxu0 %v478
  %v787 = vpop.f32.mrb[0].mxu0
  %v788 = vadd.f32 0.0, %v787
  %v789 = vpop.f32.mrb[0].mxu0
  %790 = vmatprep.mubr.f32.mxu0 0.0
  %791 = vmatmul.mubr.f32.gmra.mrb[0].mxu0 %v481
  %v792 = vpop.f32.mrb[0].mxu0
  %v793 = vadd.f32 0.0, %v792
  %v794 = vpop.f32.mrb[0].mxu0
  %795 = vmatprep.mubr.f32.mxu0 0.0
  %796 = vmatmul.mubr.f32.gmra.mrb[0].mxu0 %v484
  %v797 = vpop.f32.mrb[0].mxu0
  %v798 = vadd.f32 0.0, %v797
  %v799 = vpop.f32.mrb[0].mxu0
  %800 = vmatprep.mubr.f32.mxu0 0.0
  %801 = vmatmul.mubr.f32.gmra.mrb[0].mxu0 %v487
  %v802 = vpop.f32.mrb[0].mxu0
  %v803 = vadd.f32 0.0, %v802
  %v804 = vpop.f32.mrb[0].mxu0
  %805 = vmatprep.mubr.f32.mxu0 0.0
  %806 = vmatmul.mubr.f32.gmra.mrb[0].mxu0 %v490
  %v807 = vpop.f32.mrb[0].mxu0
  %v808 = vadd.f32 0.0, %v807
  %v809 = vpop.f32.mrb[0].mxu0
  %810 = vmatprep.mubr.f32.mxu0 0.0
  %811 = vmatmul.mubr.f32.gmra.mrb[0].mxu0 %v493
  %v812 = vpop.f32.mrb[0].mxu0
  %v813 = vadd.f32 0.0, %v812
  %v814 = vpop.f32.mrb[0].mxu0
  %815 = vmatprep.mubr.f32.mxu0 0.0
  %816 = vmatmul.mubr.f32.gmra.mrb[0].mxu0 %v496
  %v817 = vpop.f32.mrb[0].mxu0
  %v818 = vadd.f32 0.0, %v817
  %v819 = vpop.f32.mrb[0].mxu0
  %820 = vmatprep.mubr.f32.mxu0 0.0
  %821 = vmatmul.mubr.f32.gmra.mrb[0].mxu0 %v499
  %v822 = vpop.f32.mrb[0].mxu0
  %v823 = vadd.f32 0.0, %v822
  %v824 = vpop.f32.mrb[0].mxu0
  %825 = vmatprep.mubr.f32.mxu0 0.0
  %826 = vmatmul.mubr.f32.gmra.mrb[0].mxu0 %v502
  %v827 = vpop.f32.mrb[0].mxu0
  %v828 = vadd.f32 0.0, %v827
  %v829 = vpop.f32.mrb[0].mxu0
  %830 = vmatprep.mubr.f32.mxu0 0.0
  %831 = vmatmul.mubr.f32.gmra.mrb[0].mxu0 %v505
  %v832 = vpop.f32.mrb[0].mxu0
  %v833 = vadd.f32 0.0, %v832
  %v834 = vpop.f32.mrb[0].mxu0
  %835 = vmatprep.mubr.f32.mxu0 0.0
  %836 = vmatmul.mubr.f32.gmra.mrb[0].mxu0 %v508
  %v837 = vpop.f32.mrb[0].mxu0
  %v838 = vadd.f32 0.0, %v837
  %v839 = vpop.f32.mrb[0].mxu0
  %840 = vmatprep.mubr.f32.mxu0 0.0
  %841 = vmatmul.mubr.f32.gmra.mrb[0].mxu0 %v511
  %v842 = vpop.f32.mrb[0].mxu0
  %v843 = vadd.f32 0.0, %v842
  %v844 = vpop.f32.mrb[0].mxu0
  %845 = vmatprep.mubr.f32.mxu0 0.0
  %846 = vmatmul.mubr.f32.gmra.mrb[0].mxu0 %v514
  %v847 = vpop.f32.mrb[0].mxu0
  %v848 = vadd.f32 0.0, %v847
  %v849 = vpop.f32.mrb[0].mxu0
  %850 = vmatprep.mubr.f32.mxu0 0.0
  %851 = vmatmul.mubr.f32.gmra.mrb[0].mxu0 %v517
  %v852 = vpop.f32.mrb[0].mxu0
  %v853 = vadd.f32 0.0, %v852
  %v854 = vpop.f32.mrb[0].mxu0
  %855 = vmatprep.mubr.f32.mxu0 0.0
  %856 = vmatmul.mubr.f32.gmra.mrb[0].mxu0 %v520
  %v857 = vpop.f32.mrb[0].mxu0
  %v858 = vadd.f32 0.0, %v857
  %v859 = vpop.f32.mrb[0].mxu0
  %860 = vmatprep.mubr.f32.mxu0 0.0
  %861 = vmatmul.mubr.f32.gmra.mrb[0].mxu0 %v523
  %v862 = vpop.f32.mrb[0].mxu0
  %v863 = vadd.f32 0.0, %v862
  %v864 = vpop.f32.mrb[0].mxu0
  %865 = vmatprep.mubr.f32.mxu0 0.0
  %866 = vmatmul.mubr.f32.gmra.mrb[0].mxu0 %v526
  %v867 = vpop.f32.mrb[0].mxu0
  %v868 = vadd.f32 0.0, %v867
  %v869 = vpop.f32.mrb[0].mxu0
  %870 = vmatprep.mubr.f32.mxu0 0.0
  %871 = vmatmul.mubr.f32.gmra.mrb[0].mxu0 %v529
  %v872 = vpop.f32.mrb[0].mxu0
  %v873 = vadd.f32 0.0, %v872
  %v874 = vpop.f32.mrb[0].mxu0
  %875 = vmatprep.mubr.f32.mxu0 0.0
  %876 = vmatmul.mubr.f32.gmra.mrb[0].mxu0 %v532
  %v877 = vpop.f32.mrb[0].mxu0
  %v878 = vadd.f32 0.0, %v877
  %v879 = vpop.f32.mrb[0].mxu0
  %880 = vmatprep.mubr.f32.mxu0 0.0
  %881 = vmatmul.mubr.f32.gmra.mrb[0].mxu0 %v535
  %v882 = vpop.f32.mrb[0].mxu0
  %v883 = vadd.f32 0.0, %v882
  %v884 = vpop.f32.mrb[0].mxu0
  %885 = vmatprep.mubr.f32.mxu0 0.0
  %886 = vmatmul.mubr.f32.gmra.mrb[0].mxu0 %v538
  %v887 = vpop.f32.mrb[0].mxu0
  %v888 = vadd.f32 0.0, %v887
  %v889 = vpop.f32.mrb[0].mxu0
  %890 = vmatprep.mubr.f32.mxu0 0.0
  %891 = vmatmul.mubr.f32.gmra.mrb[0].mxu0 %v541
  %v892 = vpop.f32.mrb[0].mxu0
  %v893 = vadd.f32 0.0, %v892
  %v894 = vpop.f32.mrb[0].mxu0
  %895 = vmatprep.mubr.f32.mxu0 0.0
  %896 = vmatmul.mubr.f32.gmra.mrb[0].mxu0 %v544
  %v897 = vpop.f32.mrb[0].mxu0
  %v898 = vadd.f32 0.0, %v897
  %v899 = vpop.f32.mrb[0].mxu0
  %900 = vmatprep.mubr.f32.mxu0 0.0
  %901 = vmatmul.mubr.f32.gmra.mrb[0].mxu0 %v547
  %v902 = vpop.f32.mrb[0].mxu0
  %v903 = vadd.f32 0.0, %v902
  %v904 = vpop.f32.mrb[0].mxu0
  %905 = vmatprep.mubr.f32.mxu0 0.0
  %906 = vmatmul.mubr.f32.gmra.mrb[0].mxu0 %v550
  %v907 = vpop.f32.mrb[0].mxu0
  %v908 = vadd.f32 0.0, %v907
  %v909 = vpop.f32.mrb[0].mxu0
  %910 = vmatprep.mubr.f32.mxu0 0.0
  %911 = vmatmul.mubr.f32.gmra.mrb[0].mxu0 %v553
  %v912 = vpop.f32.mrb[0].mxu0
  %v913 = vadd.f32 0.0, %v912
  %v914 = vpop.f32.mrb[0].mxu0
  %915 = vmatprep.mubr.f32.mxu0 0.0
  %916 = vmatmul.mubr.f32.gmra.mrb[0].mxu0 %v556
  %v917 = vpop.f32.mrb[0].mxu0
  %v918 = vadd.f32 0.0, %v917
  %v919 = vpop.f32.mrb[0].mxu0
  %920 = vmatprep.mubr.f32.mxu0 0.0
  %921 = vmatmul.mubr.f32.gmra.mrb[0].mxu0 %v559
  %v922 = vpop.f32.mrb[0].mxu0
  %v923 = vadd.f32 0.0, %v922
  %v924 = vpop.f32.mrb[0].mxu0
  %925 = vmatprep.mubr.f32.mxu0 0.0
  %926 = vmatmul.mubr.f32.gmra.mrb[0].mxu0 %v562
  %v927 = vpop.f32.mrb[0].mxu0
  %v928 = vadd.f32 0.0, %v927
  %v929 = vpop.f32.mrb[0].mxu0
  %930 = vmatprep.mubr.f32.mxu0 0.0
  %931 = vmatmul.mubr.f32.gmra.mrb[0].mxu0 %v565
  %v932 = vpop.f32.mrb[0].mxu0
  %v933 = vadd.f32 0.0, %v932
  %v934 = vpop.f32.mrb[0].mxu0
  %935 = vmatprep.mubr.f32.mxu0 0.0
  %936 = vmatmul.mubr.f32.gmra.mrb[0].mxu0 %v568
  %v937 = vpop.f32.mrb[0].mxu0
  %v938 = vadd.f32 0.0, %v937
  %v939 = vpop.f32.mrb[0].mxu0
  %940 = vmatprep.mubr.f32.mxu0 0.0
  %941 = vmatmul.mubr.f32.gmra.mrb[0].mxu0 %v571
  %v942 = vpop.f32.mrb[0].mxu0
  %v943 = vadd.f32 0.0, %v942
  %v944 = vpop.f32.mrb[0].mxu0
  %945 = vmatprep.mubr.f32.mxu0 0.0
  %946 = vmatmul.mubr.f32.gmra.mrb[0].mxu0 %v574
  %v947 = vpop.f32.mrb[0].mxu0
  %v948 = vadd.f32 0.0, %v947
  %v949 = vpop.f32.mrb[0].mxu0
  %950 = vmatprep.mubr.f32.mxu0 0.0
  %951 = vmatmul.mubr.f32.gmra.mrb[0].mxu0 %v577
  %v952 = vpop.f32.mrb[0].mxu0
  %v953 = vadd.f32 0.0, %v952
  %v954 = vpop.f32.mrb[0].mxu0
  %955 = vmatprep.mubr.f32.mxu0 0.0
  %956 = vmatmul.mubr.f32.gmra.mrb[0].mxu0 %v580
  %v957 = vpop.f32.mrb[0].mxu0
  %v958 = vadd.f32 0.0, %v957
  %v959 = vpop.f32.mrb[0].mxu0
  %960 = vmatprep.mubr.f32.mxu0 0.0
  %961 = vmatmul.mubr.f32.gmra.mrb[0].mxu0 %v583
  %v962 = vpop.f32.mrb[0].mxu0
  %v963 = vadd.f32 0.0, %v962
  %v964 = vpop.f32.mrb[0].mxu0
  %965 = vmatprep.mubr.f32.mxu0 0.0
  %966 = vmatmul.mubr.f32.gmra.mrb[0].mxu0 %v586
  %v967 = vpop.f32.mrb[0].mxu0
  %v968 = vadd.f32 0.0, %v967
  %v969 = vpop.f32.mrb[0].mxu0
  %970 = vmatprep.mubr.f32.mxu0 0.0
  %971 = vmatmul.mubr.f32.gmra.mrb[0].mxu0 %v589
  %v972 = vpop.f32.mrb[0].mxu0
  %v973 = vadd.f32 0.0, %v972
  %v974 = vpop.f32.mrb[0].mxu0
  %975 = vdwg.mxu0
  %v977 = vsel %vm28, %v269, 0
  %v980 = vsel %vm28, %v270, 0
  %v983 = vsel %vm28, %v271, 0
  %v986 = vsel %vm28, %v272, 0
  %v989 = vsel %vm28, %v273, 0
  %v992 = vsel %vm28, %v274, 0
  %v995 = vsel %vm28, %v275, 0
  %v998 = vsel %vm28, %v276, 0
  %v1001 = vsel %vm28, %v277, 0
  %v1004 = vsel %vm28, %v278, 0
  %v1007 = vsel %vm28, %v279, 0
  %v1010 = vsel %vm28, %v280, 0
  %v1013 = vsel %vm28, %v281, 0
  %v1016 = vsel %vm28, %v282, 0
  %v1019 = vsel %vm28, %v283, 0
  %v1022 = vsel %vm28, %v284, 0
  %v1025 = vsel %vm28, %v285, 0
  %v1028 = vsel %vm28, %v286, 0
  %v1031 = vsel %vm28, %v287, 0
  %v1034 = vsel %vm28, %v288, 0
  %v1037 = vsel %vm28, %v289, 0
  %v1040 = vsel %vm28, %v290, 0
  %v1043 = vsel %vm28, %v291, 0
  %v1046 = vsel %vm28, %v292, 0
  %v1049 = vsel %vm28, %v293, 0
  %v1052 = vsel %vm28, %v294, 0
  %v1055 = vsel %vm28, %v295, 0
  %v1058 = vsel %vm28, %v296, 0
  %v1061 = vsel %vm28, %v297, 0
  %v1064 = vsel %vm28, %v298, 0
  %v1067 = vsel %vm28, %v299, 0
  %v1070 = vsel %vm28, %v300, 0
  %v1073 = vsel %vm28, %v301, 0
  %v1076 = vsel %vm28, %v302, 0
  %v1079 = vsel %vm28, %v303, 0
  %v1082 = vsel %vm28, %v304, 0
  %v1085 = vsel %vm28, %v305, 0
  %v1088 = vsel %vm28, %v306, 0
  %v1091 = vsel %vm28, %v307, 0
  %v1094 = vsel %vm28, %v308, 0
  %v1097 = vsel %vm28, %v309, 0
  %v1100 = vsel %vm28, %v310, 0
  %v1103 = vsel %vm28, %v311, 0
  %v1106 = vsel %vm28, %v312, 0
  %v1109 = vsel %vm28, %v313, 0
  %v1112 = vsel %vm28, %v314, 0
  %v1115 = vsel %vm28, %v315, 0
  %v1118 = vsel %vm28, %v316, 0
  %v1121 = vsel %vm28, %v317, 0
  %v1124 = vsel %vm28, %v318, 0
  %v1127 = vsel %vm28, %v319, 0
  %v1130 = vsel %vm28, %v320, 0
  %v1133 = vsel %vm28, %v321, 0
  %v1136 = vsel %vm28, %v322, 0
  %v1139 = vsel %vm28, %v323, 0
  %v1142 = vsel %vm28, %v324, 0
  %v1145 = vsel %vm28, %v325, 0
  %v1148 = vsel %vm28, %v326, 0
  %v1151 = vsel %vm28, %v327, 0
  %v1154 = vsel %vm28, %v328, 0
  %v1157 = vsel %vm28, %v329, 0
  %v1160 = vsel %vm28, %v330, 0
  %v1163 = vsel %vm28, %v331, 0
  %v1166 = vsel %vm28, %v332, 0
  %1168 = vmatprep.subr.mxu0 0.0
  %1169 = vmatpush1.msra.mxu0 %v333
  %1170 = vmatprep.subr.mxu0 0.0
  %1171 = vmatpush1.msra.mxu0 0.0
  %1172 = vmatprep.subr.mxu0 0.0
  %1173 = vmatpush1.msra.mxu0 0.0
  %1174 = vmatprep.subr.mxu0 0.0
  %1175 = vmatpush1.msra.mxu0 0.0
  %1176 = vmatprep.subr.mxu0 0.0
  %1177 = vmatpush1.msra.mxu0 0.0
  %1178 = vmatprep.subr.mxu0 0.0
  %1179 = vmatpush1.msra.mxu0 0.0
  %1180 = vmatprep.subr.mxu0 0.0
  %1181 = vmatpush1.msra.mxu0 0.0
  %1182 = vmatprep.subr.mxu0 0.0
  %1183 = vmatpush1.msra.mxu0 0.0
  %1184 = vmatprep.subr.mxu0 0.0
  %1185 = vmatpush1.msra.mxu0 0.0
  %1186 = vmatprep.subr.mxu0 0.0
  %1187 = vmatpush1.msra.mxu0 0.0
  %1188 = vmatprep.subr.mxu0 0.0
  %1189 = vmatpush1.msra.mxu0 0.0
  %1190 = vmatprep.subr.mxu0 0.0
  %1191 = vmatpush1.msra.mxu0 0.0
  %1192 = vmatprep.subr.mxu0 0.0
  %1193 = vmatpush1.msra.mxu0 0.0
  %1194 = vmatprep.subr.mxu0 0.0
  %1195 = vmatpush1.msra.mxu0 0.0
  %1196 = vmatprep.subr.mxu0 0.0
  %1197 = vmatpush1.msra.mxu0 0.0
  %1198 = vmatprep.subr.mxu0 0.0
  %1199 = vmatpush1.msra.mxu0 0.0
  %1200 = vmatprep.subr.mxu0 0.0
  %1201 = vmatpush1.msra.mxu0 0.0
  %1202 = vmatprep.subr.mxu0 0.0
  %1203 = vmatpush1.msra.mxu0 0.0
  %1204 = vmatprep.subr.mxu0 0.0
  %1205 = vmatpush1.msra.mxu0 0.0
  %1206 = vmatprep.subr.mxu0 0.0
  %1207 = vmatpush1.msra.mxu0 0.0
  %1208 = vmatprep.subr.mxu0 0.0
  %1209 = vmatpush1.msra.mxu0 0.0
  %1210 = vmatprep.subr.mxu0 0.0
  %1211 = vmatpush1.msra.mxu0 0.0
  %1212 = vmatprep.subr.mxu0 0.0
  %1213 = vmatpush1.msra.mxu0 0.0
  %1214 = vmatprep.subr.mxu0 0.0
  %1215 = vmatpush1.msra.mxu0 0.0
  %1216 = vmatprep.subr.mxu0 0.0
  %1217 = vmatpush1.msra.mxu0 0.0
  %1218 = vmatprep.subr.mxu0 0.0
  %1219 = vmatpush1.msra.mxu0 0.0
  %1220 = vmatprep.subr.mxu0 0.0
  %1221 = vmatpush1.msra.mxu0 0.0
  %1222 = vmatprep.subr.mxu0 0.0
  %1223 = vmatpush1.msra.mxu0 0.0
  %1224 = vmatprep.subr.mxu0 0.0
  %1225 = vmatpush1.msra.mxu0 0.0
  %1226 = vmatprep.subr.mxu0 0.0
  %1227 = vmatpush1.msra.mxu0 0.0
  %1228 = vmatprep.subr.mxu0 0.0
  %1229 = vmatpush1.msra.mxu0 0.0
  %1230 = vmatprep.subr.mxu0 0.0
  %1231 = vmatpush1.msra.mxu0 0.0
  %1232 = vmatprep.mubr.f32.mxu0 0.0
  %1233 = vmatmul.mubr.f32.gmra.mrb[0].mxu0 %v977
  %v1234 = vpop.f32.mrb[0].mxu0
  %v1235 = vadd.f32 %v658, %v1234
  %v1236 = vpop.f32.mrb[0].mxu0
  %1237 = vmatprep.mubr.f32.mxu0 0.0
  %1238 = vmatmul.mubr.f32.gmra.mrb[0].mxu0 %v980
  %v1239 = vpop.f32.mrb[0].mxu0
  %v1240 = vadd.f32 %v663, %v1239
  %v1241 = vpop.f32.mrb[0].mxu0
  %1242 = vmatprep.mubr.f32.mxu0 0.0
  %1243 = vmatmul.mubr.f32.gmra.mrb[0].mxu0 %v983
  %v1244 = vpop.f32.mrb[0].mxu0
  %v1245 = vadd.f32 %v668, %v1244
  %v1246 = vpop.f32.mrb[0].mxu0
  %1247 = vmatprep.mubr.f32.mxu0 0.0
  %1248 = vmatmul.mubr.f32.gmra.mrb[0].mxu0 %v986
  %v1249 = vpop.f32.mrb[0].mxu0
  %v1250 = vadd.f32 %v673, %v1249
  %v1251 = vpop.f32.mrb[0].mxu0
  %1252 = vmatprep.mubr.f32.mxu0 0.0
  %1253 = vmatmul.mubr.f32.gmra.mrb[0].mxu0 %v989
  %v1254 = vpop.f32.mrb[0].mxu0
  %v1255 = vadd.f32 %v678, %v1254
  %v1256 = vpop.f32.mrb[0].mxu0
  %1257 = vmatprep.mubr.f32.mxu0 0.0
  %1258 = vmatmul.mubr.f32.gmra.mrb[0].mxu0 %v992
  %v1259 = vpop.f32.mrb[0].mxu0
  %v1260 = vadd.f32 %v683, %v1259
  %v1261 = vpop.f32.mrb[0].mxu0
  %1262 = vmatprep.mubr.f32.mxu0 0.0
  %1263 = vmatmul.mubr.f32.gmra.mrb[0].mxu0 %v995
  %v1264 = vpop.f32.mrb[0].mxu0
  %v1265 = vadd.f32 %v688, %v1264
  %v1266 = vpop.f32.mrb[0].mxu0
  %1267 = vmatprep.mubr.f32.mxu0 0.0
  %1268 = vmatmul.mubr.f32.gmra.mrb[0].mxu0 %v998
  %v1269 = vpop.f32.mrb[0].mxu0
  %v1270 = vadd.f32 %v693, %v1269
  %v1271 = vpop.f32.mrb[0].mxu0
  %1272 = vmatprep.mubr.f32.mxu0 0.0
  %1273 = vmatmul.mubr.f32.gmra.mrb[0].mxu0 %v1001
  %v1274 = vpop.f32.mrb[0].mxu0
  %v1275 = vadd.f32 %v698, %v1274
  %v1276 = vpop.f32.mrb[0].mxu0
  %1277 = vmatprep.mubr.f32.mxu0 0.0
  %1278 = vmatmul.mubr.f32.gmra.mrb[0].mxu0 %v1004
  %v1279 = vpop.f32.mrb[0].mxu0
  %v1280 = vadd.f32 %v703, %v1279
  %v1281 = vpop.f32.mrb[0].mxu0
  %1282 = vmatprep.mubr.f32.mxu0 0.0
  %1283 = vmatmul.mubr.f32.gmra.mrb[0].mxu0 %v1007
  %v1284 = vpop.f32.mrb[0].mxu0
  %v1285 = vadd.f32 %v708, %v1284
  %v1286 = vpop.f32.mrb[0].mxu0
  %1287 = vmatprep.mubr.f32.mxu0 0.0
  %1288 = vmatmul.mubr.f32.gmra.mrb[0].mxu0 %v1010
  %v1289 = vpop.f32.mrb[0].mxu0
  %v1290 = vadd.f32 %v713, %v1289
  %v1291 = vpop.f32.mrb[0].mxu0
  %1292 = vmatprep.mubr.f32.mxu0 0.0
  %1293 = vmatmul.mubr.f32.gmra.mrb[0].mxu0 %v1013
  %v1294 = vpop.f32.mrb[0].mxu0
  %v1295 = vadd.f32 %v718, %v1294
  %v1296 = vpop.f32.mrb[0].mxu0
  %1297 = vmatprep.mubr.f32.mxu0 0.0
  %1298 = vmatmul.mubr.f32.gmra.mrb[0].mxu0 %v1016
  %v1299 = vpop.f32.mrb[0].mxu0
  %v1300 = vadd.f32 %v723, %v1299
  %v1301 = vpop.f32.mrb[0].mxu0
  %1302 = vmatprep.mubr.f32.mxu0 0.0
  %1303 = vmatmul.mubr.f32.gmra.mrb[0].mxu0 %v1019
  %v1304 = vpop.f32.mrb[0].mxu0
  %v1305 = vadd.f32 %v728, %v1304
  %v1306 = vpop.f32.mrb[0].mxu0
  %1307 = vmatprep.mubr.f32.mxu0 0.0
  %1308 = vmatmul.mubr.f32.gmra.mrb[0].mxu0 %v1022
  %v1309 = vpop.f32.mrb[0].mxu0
  %v1310 = vadd.f32 %v733, %v1309
  %v1311 = vpop.f32.mrb[0].mxu0
  %1312 = vmatprep.mubr.f32.mxu0 0.0
  %1313 = vmatmul.mubr.f32.gmra.mrb[0].mxu0 %v1025
  %v1314 = vpop.f32.mrb[0].mxu0
  %v1315 = vadd.f32 %v738, %v1314
  %v1316 = vpop.f32.mrb[0].mxu0
  %1317 = vmatprep.mubr.f32.mxu0 0.0
  %1318 = vmatmul.mubr.f32.gmra.mrb[0].mxu0 %v1028
  %v1319 = vpop.f32.mrb[0].mxu0
  %v1320 = vadd.f32 %v743, %v1319
  %v1321 = vpop.f32.mrb[0].mxu0
  %1322 = vmatprep.mubr.f32.mxu0 0.0
  %1323 = vmatmul.mubr.f32.gmra.mrb[0].mxu0 %v1031
  %v1324 = vpop.f32.mrb[0].mxu0
  %v1325 = vadd.f32 %v748, %v1324
  %v1326 = vpop.f32.mrb[0].mxu0
  %1327 = vmatprep.mubr.f32.mxu0 0.0
  %1328 = vmatmul.mubr.f32.gmra.mrb[0].mxu0 %v1034
  %v1329 = vpop.f32.mrb[0].mxu0
  %v1330 = vadd.f32 %v753, %v1329
  %v1331 = vpop.f32.mrb[0].mxu0
  %1332 = vmatprep.mubr.f32.mxu0 0.0
  %1333 = vmatmul.mubr.f32.gmra.mrb[0].mxu0 %v1037
  %v1334 = vpop.f32.mrb[0].mxu0
  %v1335 = vadd.f32 %v758, %v1334
  %v1336 = vpop.f32.mrb[0].mxu0
  %1337 = vmatprep.mubr.f32.mxu0 0.0
  %1338 = vmatmul.mubr.f32.gmra.mrb[0].mxu0 %v1040
  %v1339 = vpop.f32.mrb[0].mxu0
  %v1340 = vadd.f32 %v763, %v1339
  %v1341 = vpop.f32.mrb[0].mxu0
  %1342 = vmatprep.mubr.f32.mxu0 0.0
  %1343 = vmatmul.mubr.f32.gmra.mrb[0].mxu0 %v1043
  %v1344 = vpop.f32.mrb[0].mxu0
  %v1345 = vadd.f32 %v768, %v1344
  %v1346 = vpop.f32.mrb[0].mxu0
  %1347 = vmatprep.mubr.f32.mxu0 0.0
  %1348 = vmatmul.mubr.f32.gmra.mrb[0].mxu0 %v1046
  %v1349 = vpop.f32.mrb[0].mxu0
  %v1350 = vadd.f32 %v773, %v1349
  %v1351 = vpop.f32.mrb[0].mxu0
  %1352 = vmatprep.mubr.f32.mxu0 0.0
  %1353 = vmatmul.mubr.f32.gmra.mrb[0].mxu0 %v1049
  %v1354 = vpop.f32.mrb[0].mxu0
  %v1355 = vadd.f32 %v778, %v1354
  %v1356 = vpop.f32.mrb[0].mxu0
  %1357 = vmatprep.mubr.f32.mxu0 0.0
  %1358 = vmatmul.mubr.f32.gmra.mrb[0].mxu0 %v1052
  %v1359 = vpop.f32.mrb[0].mxu0
  %v1360 = vadd.f32 %v783, %v1359
  %v1361 = vpop.f32.mrb[0].mxu0
  %1362 = vmatprep.mubr.f32.mxu0 0.0
  %1363 = vmatmul.mubr.f32.gmra.mrb[0].mxu0 %v1055
  %v1364 = vpop.f32.mrb[0].mxu0
  %v1365 = vadd.f32 %v788, %v1364
  %v1366 = vpop.f32.mrb[0].mxu0
  %1367 = vmatprep.mubr.f32.mxu0 0.0
  %1368 = vmatmul.mubr.f32.gmra.mrb[0].mxu0 %v1058
  %v1369 = vpop.f32.mrb[0].mxu0
  %v1370 = vadd.f32 %v793, %v1369
  %v1371 = vpop.f32.mrb[0].mxu0
  %1372 = vmatprep.mubr.f32.mxu0 0.0
  %1373 = vmatmul.mubr.f32.gmra.mrb[0].mxu0 %v1061
  %v1374 = vpop.f32.mrb[0].mxu0
  %v1375 = vadd.f32 %v798, %v1374
  %v1376 = vpop.f32.mrb[0].mxu0
  %1377 = vmatprep.mubr.f32.mxu0 0.0
  %1378 = vmatmul.mubr.f32.gmra.mrb[0].mxu0 %v1064
  %v1379 = vpop.f32.mrb[0].mxu0
  %v1380 = vadd.f32 %v803, %v1379
  %v1381 = vpop.f32.mrb[0].mxu0
  %1382 = vmatprep.mubr.f32.mxu0 0.0
  %1383 = vmatmul.mubr.f32.gmra.mrb[0].mxu0 %v1067
  %v1384 = vpop.f32.mrb[0].mxu0
  %v1385 = vadd.f32 %v808, %v1384
  %v1386 = vpop.f32.mrb[0].mxu0
  %1387 = vmatprep.mubr.f32.mxu0 0.0
  %1388 = vmatmul.mubr.f32.gmra.mrb[0].mxu0 %v1070
  %v1389 = vpop.f32.mrb[0].mxu0
  %v1390 = vadd.f32 %v813, %v1389
  %v1391 = vpop.f32.mrb[0].mxu0
  %1392 = vmatprep.mubr.f32.mxu0 0.0
  %1393 = vmatmul.mubr.f32.gmra.mrb[0].mxu0 %v1073
  %v1394 = vpop.f32.mrb[0].mxu0
  %v1395 = vadd.f32 %v818, %v1394
  %v1396 = vpop.f32.mrb[0].mxu0
  %1397 = vmatprep.mubr.f32.mxu0 0.0
  %1398 = vmatmul.mubr.f32.gmra.mrb[0].mxu0 %v1076
  %v1399 = vpop.f32.mrb[0].mxu0
  %v1400 = vadd.f32 %v823, %v1399
  %v1401 = vpop.f32.mrb[0].mxu0
  %1402 = vmatprep.mubr.f32.mxu0 0.0
  %1403 = vmatmul.mubr.f32.gmra.mrb[0].mxu0 %v1079
  %v1404 = vpop.f32.mrb[0].mxu0
  %v1405 = vadd.f32 %v828, %v1404
  %v1406 = vpop.f32.mrb[0].mxu0
  %1407 = vmatprep.mubr.f32.mxu0 0.0
  %1408 = vmatmul.mubr.f32.gmra.mrb[0].mxu0 %v1082
  %v1409 = vpop.f32.mrb[0].mxu0
  %v1410 = vadd.f32 %v833, %v1409
  %v1411 = vpop.f32.mrb[0].mxu0
  %1412 = vmatprep.mubr.f32.mxu0 0.0
  %1413 = vmatmul.mubr.f32.gmra.mrb[0].mxu0 %v1085
  %v1414 = vpop.f32.mrb[0].mxu0
  %v1415 = vadd.f32 %v838, %v1414
  %v1416 = vpop.f32.mrb[0].mxu0
  %1417 = vmatprep.mubr.f32.mxu0 0.0
  %1418 = vmatmul.mubr.f32.gmra.mrb[0].mxu0 %v1088
  %v1419 = vpop.f32.mrb[0].mxu0
  %v1420 = vadd.f32 %v843, %v1419
  %v1421 = vpop.f32.mrb[0].mxu0
  %1422 = vmatprep.mubr.f32.mxu0 0.0
  %1423 = vmatmul.mubr.f32.gmra.mrb[0].mxu0 %v1091
  %v1424 = vpop.f32.mrb[0].mxu0
  %v1425 = vadd.f32 %v848, %v1424
  %v1426 = vpop.f32.mrb[0].mxu0
  %1427 = vmatprep.mubr.f32.mxu0 0.0
  %1428 = vmatmul.mubr.f32.gmra.mrb[0].mxu0 %v1094
  %v1429 = vpop.f32.mrb[0].mxu0
  %v1430 = vadd.f32 %v853, %v1429
  %v1431 = vpop.f32.mrb[0].mxu0
  %1432 = vmatprep.mubr.f32.mxu0 0.0
  %1433 = vmatmul.mubr.f32.gmra.mrb[0].mxu0 %v1097
  %v1434 = vpop.f32.mrb[0].mxu0
  %v1435 = vadd.f32 %v858, %v1434
  %v1436 = vpop.f32.mrb[0].mxu0
  %1437 = vmatprep.mubr.f32.mxu0 0.0
  %1438 = vmatmul.mubr.f32.gmra.mrb[0].mxu0 %v1100
  %v1439 = vpop.f32.mrb[0].mxu0
  %v1440 = vadd.f32 %v863, %v1439
  %v1441 = vpop.f32.mrb[0].mxu0
  %1442 = vmatprep.mubr.f32.mxu0 0.0
  %1443 = vmatmul.mubr.f32.gmra.mrb[0].mxu0 %v1103
  %v1444 = vpop.f32.mrb[0].mxu0
  %v1445 = vadd.f32 %v868, %v1444
  %v1446 = vpop.f32.mrb[0].mxu0
  %1447 = vmatprep.mubr.f32.mxu0 0.0
  %1448 = vmatmul.mubr.f32.gmra.mrb[0].mxu0 %v1106
  %v1449 = vpop.f32.mrb[0].mxu0
  %v1450 = vadd.f32 %v873, %v1449
  %v1451 = vpop.f32.mrb[0].mxu0
  %1452 = vmatprep.mubr.f32.mxu0 0.0
  %1453 = vmatmul.mubr.f32.gmra.mrb[0].mxu0 %v1109
  %v1454 = vpop.f32.mrb[0].mxu0
  %v1455 = vadd.f32 %v878, %v1454
  %v1456 = vpop.f32.mrb[0].mxu0
  %1457 = vmatprep.mubr.f32.mxu0 0.0
  %1458 = vmatmul.mubr.f32.gmra.mrb[0].mxu0 %v1112
  %v1459 = vpop.f32.mrb[0].mxu0
  %v1460 = vadd.f32 %v883, %v1459
  %v1461 = vpop.f32.mrb[0].mxu0
  %1462 = vmatprep.mubr.f32.mxu0 0.0
  %1463 = vmatmul.mubr.f32.gmra.mrb[0].mxu0 %v1115
  %v1464 = vpop.f32.mrb[0].mxu0
  %v1465 = vadd.f32 %v888, %v1464
  %v1466 = vpop.f32.mrb[0].mxu0
  %1467 = vmatprep.mubr.f32.mxu0 0.0
  %1468 = vmatmul.mubr.f32.gmra.mrb[0].mxu0 %v1118
  %v1469 = vpop.f32.mrb[0].mxu0
  %v1470 = vadd.f32 %v893, %v1469
  %v1471 = vpop.f32.mrb[0].mxu0
  %1472 = vmatprep.mubr.f32.mxu0 0.0
  %1473 = vmatmul.mubr.f32.gmra.mrb[0].mxu0 %v1121
  %v1474 = vpop.f32.mrb[0].mxu0
  %v1475 = vadd.f32 %v898, %v1474
  %v1476 = vpop.f32.mrb[0].mxu0
  %1477 = vmatprep.mubr.f32.mxu0 0.0
  %1478 = vmatmul.mubr.f32.gmra.mrb[0].mxu0 %v1124
  %v1479 = vpop.f32.mrb[0].mxu0
  %v1480 = vadd.f32 %v903, %v1479
  %v1481 = vpop.f32.mrb[0].mxu0
  %1482 = vmatprep.mubr.f32.mxu0 0.0
  %1483 = vmatmul.mubr.f32.gmra.mrb[0].mxu0 %v1127
  %v1484 = vpop.f32.mrb[0].mxu0
  %v1485 = vadd.f32 %v908, %v1484
  %v1486 = vpop.f32.mrb[0].mxu0
  %1487 = vmatprep.mubr.f32.mxu0 0.0
  %1488 = vmatmul.mubr.f32.gmra.mrb[0].mxu0 %v1130
  %v1489 = vpop.f32.mrb[0].mxu0
  %v1490 = vadd.f32 %v913, %v1489
  %v1491 = vpop.f32.mrb[0].mxu0
  %1492 = vmatprep.mubr.f32.mxu0 0.0
  %1493 = vmatmul.mubr.f32.gmra.mrb[0].mxu0 %v1133
  %v1494 = vpop.f32.mrb[0].mxu0
  %v1495 = vadd.f32 %v918, %v1494
  %v1496 = vpop.f32.mrb[0].mxu0
  %1497 = vmatprep.mubr.f32.mxu0 0.0
  %1498 = vmatmul.mubr.f32.gmra.mrb[0].mxu0 %v1136
  %v1499 = vpop.f32.mrb[0].mxu0
  %v1500 = vadd.f32 %v923, %v1499
  %v1501 = vpop.f32.mrb[0].mxu0
  %1502 = vmatprep.mubr.f32.mxu0 0.0
  %1503 = vmatmul.mubr.f32.gmra.mrb[0].mxu0 %v1139
  %v1504 = vpop.f32.mrb[0].mxu0
  %v1505 = vadd.f32 %v928, %v1504
  %v1506 = vpop.f32.mrb[0].mxu0
  %1507 = vmatprep.mubr.f32.mxu0 0.0
  %1508 = vmatmul.mubr.f32.gmra.mrb[0].mxu0 %v1142
  %v1509 = vpop.f32.mrb[0].mxu0
  %v1510 = vadd.f32 %v933, %v1509
  %v1511 = vpop.f32.mrb[0].mxu0
  %1512 = vmatprep.mubr.f32.mxu0 0.0
  %1513 = vmatmul.mubr.f32.gmra.mrb[0].mxu0 %v1145
  %v1514 = vpop.f32.mrb[0].mxu0
  %v1515 = vadd.f32 %v938, %v1514
  %v1516 = vpop.f32.mrb[0].mxu0
  %1517 = vmatprep.mubr.f32.mxu0 0.0
  %1518 = vmatmul.mubr.f32.gmra.mrb[0].mxu0 %v1148
  %v1519 = vpop.f32.mrb[0].mxu0
  %v1520 = vadd.f32 %v943, %v1519
  %v1521 = vpop.f32.mrb[0].mxu0
  %1522 = vmatprep.mubr.f32.mxu0 0.0
  %1523 = vmatmul.mubr.f32.gmra.mrb[0].mxu0 %v1151
  %v1524 = vpop.f32.mrb[0].mxu0
  %v1525 = vadd.f32 %v948, %v1524
  %v1526 = vpop.f32.mrb[0].mxu0
  %1527 = vmatprep.mubr.f32.mxu0 0.0
  %1528 = vmatmul.mubr.f32.gmra.mrb[0].mxu0 %v1154
  %v1529 = vpop.f32.mrb[0].mxu0
  %v1530 = vadd.f32 %v953, %v1529
  %v1531 = vpop.f32.mrb[0].mxu0
  %1532 = vmatprep.mubr.f32.mxu0 0.0
  %1533 = vmatmul.mubr.f32.gmra.mrb[0].mxu0 %v1157
  %v1534 = vpop.f32.mrb[0].mxu0
  %v1535 = vadd.f32 %v958, %v1534
  %v1536 = vpop.f32.mrb[0].mxu0
  %1537 = vmatprep.mubr.f32.mxu0 0.0
  %1538 = vmatmul.mubr.f32.gmra.mrb[0].mxu0 %v1160
  %v1539 = vpop.f32.mrb[0].mxu0
  %v1540 = vadd.f32 %v963, %v1539
  %v1541 = vpop.f32.mrb[0].mxu0
  %1542 = vmatprep.mubr.f32.mxu0 0.0
  %1543 = vmatmul.mubr.f32.gmra.mrb[0].mxu0 %v1163
  %v1544 = vpop.f32.mrb[0].mxu0
  %v1545 = vadd.f32 %v968, %v1544
  %v1546 = vpop.f32.mrb[0].mxu0
  %1547 = vmatprep.mubr.f32.mxu0 0.0
  %1548 = vmatmul.mubr.f32.gmra.mrb[0].mxu0 %v1166
  %v1549 = vpop.f32.mrb[0].mxu0
  %v1550 = vadd.f32 %v973, %v1549
  %v1551 = vpop.f32.mrb[0].mxu0
  %1552 = vdwg.mxu0
  %v1553 = vld [vmem:[#allocation2 + $0x2] sm:$0xff]
  %v1554 = vld [vmem:[#allocation2 + $0xa] sm:$0xff]
  %v1555 = vld [vmem:[#allocation2 + $0x1a] sm:$0xff]
  %v1556 = vld [vmem:[#allocation2 + $0x22] sm:$0xff]
  %v1557 = vld [vmem:[#allocation2 + $0x32] sm:$0xff]
  %v1558 = vld [vmem:[#allocation2 + $0x3a] sm:$0xff]
  %v1559 = vld [vmem:[#allocation2 + $0x4a] sm:$0xff]
  %v1560 = vld [vmem:[#allocation2 + $0x52] sm:$0xff]
  %v1561 = vld [vmem:[#allocation2 + $0x62] sm:$0xff]
  %v1562 = vld [vmem:[#allocation2 + $0x6a] sm:$0xff]
  %v1563 = vld [vmem:[#allocation2 + $0x7a] sm:$0xff]
  %v1564 = vld [vmem:[#allocation2 + $0x82] sm:$0xff]
  %v1565 = vld [vmem:[#allocation2 + $0x92] sm:$0xff]
  %v1566 = vld [vmem:[#allocation2 + $0x9a] sm:$0xff]
  %v1567 = vld [vmem:[#allocation2 + $0xaa] sm:$0xff]
  %v1568 = vld [vmem:[#allocation2 + $0xb2] sm:$0xff]
  %v1569 = vld [vmem:[#allocation2 + $0xc2] sm:$0xff]
  %v1570 = vld [vmem:[#allocation2 + $0xca] sm:$0xff]
  %v1571 = vld [vmem:[#allocation2 + $0xda] sm:$0xff]
  %v1572 = vld [vmem:[#allocation2 + $0xe2] sm:$0xff]
  %v1573 = vld [vmem:[#allocation2 + $0xf2] sm:$0xff]
  %v1574 = vld [vmem:[#allocation2 + $0xfa] sm:$0xff]
  %v1575 = vld [vmem:[#allocation2 + $0x10a] sm:$0xff]
  %v1576 = vld [vmem:[#allocation2 + $0x112] sm:$0xff]
  %v1577 = vld [vmem:[#allocation2 + $0x122] sm:$0xff]
  %v1578 = vld [vmem:[#allocation2 + $0x12a] sm:$0xff]
  %v1579 = vld [vmem:[#allocation2 + $0x13a] sm:$0xff]
  %v1580 = vld [vmem:[#allocation2 + $0x142] sm:$0xff]
  %v1581 = vld [vmem:[#allocation2 + $0x152] sm:$0xff]
  %v1582 = vld [vmem:[#allocation2 + $0x15a] sm:$0xff]
  %v1583 = vld [vmem:[#allocation2 + $0x16a] sm:$0xff]
  %v1584 = vld [vmem:[#allocation2 + $0x172] sm:$0xff]
  %v1585 = vld [vmem:[#allocation2 + $0x1b2] sm:$0xff]
  %v1586 = vld [vmem:[#allocation2 + $0x1ba] sm:$0xff]
  %v1587 = vld [vmem:[#allocation2 + $0x1ca] sm:$0xff]
  %v1588 = vld [vmem:[#allocation2 + $0x1d2] sm:$0xff]
  %v1589 = vld [vmem:[#allocation2 + $0x1e2] sm:$0xff]
  %v1590 = vld [vmem:[#allocation2 + $0x1ea] sm:$0xff]
  %v1591 = vld [vmem:[#allocation2 + $0x1fa] sm:$0xff]
  %v1592 = vld [vmem:[#allocation2 + $0x202] sm:$0xff]
  %v1593 = vld [vmem:[#allocation2 + $0x212] sm:$0xff]
  %v1594 = vld [vmem:[#allocation2 + $0x21a] sm:$0xff]
  %v1595 = vld [vmem:[#allocation2 + $0x22a] sm:$0xff]
  %v1596 = vld [vmem:[#allocation2 + $0x232] sm:$0xff]
  %v1597 = vld [vmem:[#allocation2 + $0x242] sm:$0xff]
  %v1598 = vld [vmem:[#allocation2 + $0x24a] sm:$0xff]
  %v1599 = vld [vmem:[#allocation2 + $0x25a] sm:$0xff]
  %v1600 = vld [vmem:[#allocation2 + $0x262] sm:$0xff]
  %v1601 = vld [vmem:[#allocation2 + $0x272] sm:$0xff]
  %v1602 = vld [vmem:[#allocation2 + $0x27a] sm:$0xff]
  %v1603 = vld [vmem:[#allocation2 + $0x28a] sm:$0xff]
  %v1604 = vld [vmem:[#allocation2 + $0x292] sm:$0xff]
  %v1605 = vld [vmem:[#allocation2 + $0x2a2] sm:$0xff]
  %v1606 = vld [vmem:[#allocation2 + $0x2aa] sm:$0xff]
  %v1607 = vld [vmem:[#allocation2 + $0x2ba] sm:$0xff]
  %v1608 = vld [vmem:[#allocation2 + $0x2c2] sm:$0xff]
  %v1609 = vld [vmem:[#allocation2 + $0x2d2] sm:$0xff]
  %v1610 = vld [vmem:[#allocation2 + $0x2da] sm:$0xff]
  %v1611 = vld [vmem:[#allocation2 + $0x2ea] sm:$0xff]
  %v1612 = vld [vmem:[#allocation2 + $0x2f2] sm:$0xff]
  %v1613 = vld [vmem:[#allocation2 + $0x302] sm:$0xff]
  %v1614 = vld [vmem:[#allocation2 + $0x30a] sm:$0xff]
  %v1615 = vld [vmem:[#allocation2 + $0x31a] sm:$0xff]
  %v1616 = vld [vmem:[#allocation2 + $0x322] sm:$0xff]
  %v1617 = vld [vmem:[%s1 + $0x10] sm:$0xff]
  %v1619 = vsel %vm28, %v1553, 0
  %v1622 = vsel %vm28, %v1554, 0
  %v1625 = vsel %vm28, %v1555, 0
  %v1628 = vsel %vm28, %v1556, 0
  %v1631 = vsel %vm28, %v1557, 0
  %v1634 = vsel %vm28, %v1558, 0
  %v1637 = vsel %vm28, %v1559, 0
  %v1640 = vsel %vm28, %v1560, 0
  %v1643 = vsel %vm28, %v1561, 0
  %v1646 = vsel %vm28, %v1562, 0
  %v1649 = vsel %vm28, %v1563, 0
  %v1652 = vsel %vm28, %v1564, 0
  %v1655 = vsel %vm28, %v1565, 0
  %v1658 = vsel %vm28, %v1566, 0
  %v1661 = vsel %vm28, %v1567, 0
  %v1664 = vsel %vm28, %v1568, 0
  %v1667 = vsel %vm28, %v1569, 0
  %v1670 = vsel %vm28, %v1570, 0
  %v1673 = vsel %vm28, %v1571, 0
  %v1676 = vsel %vm28, %v1572, 0
  %v1679 = vsel %vm28, %v1573, 0
  %v1682 = vsel %vm28, %v1574, 0
  %v1685 = vsel %vm28, %v1575, 0
  %v1688 = vsel %vm28, %v1576, 0
  %v1691 = vsel %vm28, %v1577, 0
  %v1694 = vsel %vm28, %v1578, 0
  %v1697 = vsel %vm28, %v1579, 0
  %v1700 = vsel %vm28, %v1580, 0
  %v1703 = vsel %vm28, %v1581, 0
  %v1706 = vsel %vm28, %v1582, 0
  %v1709 = vsel %vm28, %v1583, 0
  %v1712 = vsel %vm28, %v1584, 0
  %v1715 = vsel %vm28, %v1585, 0
  %v1718 = vsel %vm28, %v1586, 0
  %v1721 = vsel %vm28, %v1587, 0
  %v1724 = vsel %vm28, %v1588, 0
  %v1727 = vsel %vm28, %v1589, 0
  %v1730 = vsel %vm28, %v1590, 0
  %v1733 = vsel %vm28, %v1591, 0
  %v1736 = vsel %vm28, %v1592, 0
  %v1739 = vsel %vm28, %v1593, 0
  %v1742 = vsel %vm28, %v1594, 0
  %v1745 = vsel %vm28, %v1595, 0
  %v1748 = vsel %vm28, %v1596, 0
  %v1751 = vsel %vm28, %v1597, 0
  %v1754 = vsel %vm28, %v1598, 0
  %v1757 = vsel %vm28, %v1599, 0
  %v1760 = vsel %vm28, %v1600, 0
  %v1763 = vsel %vm28, %v1601, 0
  %v1766 = vsel %vm28, %v1602, 0
  %v1769 = vsel %vm28, %v1603, 0
  %v1772 = vsel %vm28, %v1604, 0
  %v1775 = vsel %vm28, %v1605, 0
  %v1778 = vsel %vm28, %v1606, 0
  %v1781 = vsel %vm28, %v1607, 0
  %v1784 = vsel %vm28, %v1608, 0
  %v1787 = vsel %vm28, %v1609, 0
  %v1790 = vsel %vm28, %v1610, 0
  %v1793 = vsel %vm28, %v1611, 0
  %v1796 = vsel %vm28, %v1612, 0
  %v1799 = vsel %vm28, %v1613, 0
  %v1802 = vsel %vm28, %v1614, 0
  %v1805 = vsel %vm28, %v1615, 0
  %v1808 = vsel %vm28, %v1616, 0
  %1810 = vmatprep.subr.mxu0 0.0
  %1811 = vmatpush1.msra.mxu0 %v1617
  %1812 = vmatprep.subr.mxu0 0.0
  %1813 = vmatpush1.msra.mxu0 0.0
  %1814 = vmatprep.subr.mxu0 0.0
  %1815 = vmatpush1.msra.mxu0 0.0
  %1816 = vmatprep.subr.mxu0 0.0
  %1817 = vmatpush1.msra.mxu0 0.0
  %1818 = vmatprep.subr.mxu0 0.0
  %1819 = vmatpush1.msra.mxu0 0.0
  %1820 = vmatprep.subr.mxu0 0.0
  %1821 = vmatpush1.msra.mxu0 0.0
  %1822 = vmatprep.subr.mxu0 0.0
  %1823 = vmatpush1.msra.mxu0 0.0
  %1824 = vmatprep.subr.mxu0 0.0
  %1825 = vmatpush1.msra.mxu0 0.0
  %1826 = vmatprep.subr.mxu0 0.0
  %1827 = vmatpush1.msra.mxu0 0.0
  %1828 = vmatprep.subr.mxu0 0.0
  %1829 = vmatpush1.msra.mxu0 0.0
  %1830 = vmatprep.subr.mxu0 0.0
  %1831 = vmatpush1.msra.mxu0 0.0
  %1832 = vmatprep.subr.mxu0 0.0
  %1833 = vmatpush1.msra.mxu0 0.0
  %1834 = vmatprep.subr.mxu0 0.0
  %1835 = vmatpush1.msra.mxu0 0.0
  %1836 = vmatprep.subr.mxu0 0.0
  %1837 = vmatpush1.msra.mxu0 0.0
  %1838 = vmatprep.subr.mxu0 0.0
  %1839 = vmatpush1.msra.mxu0 0.0
  %1840 = vmatprep.subr.mxu0 0.0
  %1841 = vmatpush1.msra.mxu0 0.0
  %1842 = vmatprep.subr.mxu0 0.0
  %1843 = vmatpush1.msra.mxu0 0.0
  %1844 = vmatprep.subr.mxu0 0.0
  %1845 = vmatpush1.msra.mxu0 0.0
  %1846 = vmatprep.subr.mxu0 0.0
  %1847 = vmatpush1.msra.mxu0 0.0
  %1848 = vmatprep.subr.mxu0 0.0
  %1849 = vmatpush1.msra.mxu0 0.0
  %1850 = vmatprep.subr.mxu0 0.0
  %1851 = vmatpush1.msra.mxu0 0.0
  %1852 = vmatprep.subr.mxu0 0.0
  %1853 = vmatpush1.msra.mxu0 0.0
  %1854 = vmatprep.subr.mxu0 0.0
  %1855 = vmatpush1.msra.mxu0 0.0
  %1856 = vmatprep.subr.mxu0 0.0
  %1857 = vmatpush1.msra.mxu0 0.0
  %1858 = vmatprep.subr.mxu0 0.0
  %1859 = vmatpush1.msra.mxu0 0.0
  %1860 = vmatprep.subr.mxu0 0.0
  %1861 = vmatpush1.msra.mxu0 0.0
  %1862 = vmatprep.subr.mxu0 0.0
  %1863 = vmatpush1.msra.mxu0 0.0
  %1864 = vmatprep.subr.mxu0 0.0
  %1865 = vmatpush1.msra.mxu0 0.0
  %1866 = vmatprep.subr.mxu0 0.0
  %1867 = vmatpush1.msra.mxu0 0.0
  %1868 = vmatprep.subr.mxu0 0.0
  %1869 = vmatpush1.msra.mxu0 0.0
  %1870 = vmatprep.subr.mxu0 0.0
  %1871 = vmatpush1.msra.mxu0 0.0
  %1872 = vmatprep.subr.mxu0 0.0
  %1873 = vmatpush1.msra.mxu0 0.0
  %1874 = vmatprep.mubr.f32.mxu0 0.0
  %1875 = vmatmul.mubr.f32.gmra.mrb[0].mxu0 %v1619
  %v1876 = vpop.f32.mrb[0].mxu0
  %v1877 = vadd.f32 0.0, %v1876
  %v1878 = vpop.f32.mrb[0].mxu0
  %1879 = vmatprep.mubr.f32.mxu0 0.0
  %1880 = vmatmul.mubr.f32.gmra.mrb[0].mxu0 %v1622
  %v1881 = vpop.f32.mrb[0].mxu0
  %v1882 = vadd.f32 0.0, %v1881
  %v1883 = vpop.f32.mrb[0].mxu0
  %1884 = vmatprep.mubr.f32.mxu0 0.0
  %1885 = vmatmul.mubr.f32.gmra.mrb[0].mxu0 %v1625
  %v1886 = vpop.f32.mrb[0].mxu0
  %v1887 = vadd.f32 0.0, %v1886
  %v1888 = vpop.f32.mrb[0].mxu0
  %1889 = vmatprep.mubr.f32.mxu0 0.0
  %1890 = vmatmul.mubr.f32.gmra.mrb[0].mxu0 %v1628
  %v1891 = vpop.f32.mrb[0].mxu0
  %v1892 = vadd.f32 0.0, %v1891
  %v1893 = vpop.f32.mrb[0].mxu0
  %1894 = vmatprep.mubr.f32.mxu0 0.0
  %1895 = vmatmul.mubr.f32.gmra.mrb[0].mxu0 %v1631
  %v1896 = vpop.f32.mrb[0].mxu0
  %v1897 = vadd.f32 0.0, %v1896
  %v1898 = vpop.f32.mrb[0].mxu0
  %1899 = vmatprep.mubr.f32.mxu0 0.0
  %1900 = vmatmul.mubr.f32.gmra.mrb[0].mxu0 %v1634
  %v1901 = vpop.f32.mrb[0].mxu0
  %v1902 = vadd.f32 0.0, %v1901
  %v1903 = vpop.f32.mrb[0].mxu0
  %1904 = vmatprep.mubr.f32.mxu0 0.0
  %1905 = vmatmul.mubr.f32.gmra.mrb[0].mxu0 %v1637
  %v1906 = vpop.f32.mrb[0].mxu0
  %v1907 = vadd.f32 0.0, %v1906
  %v1908 = vpop.f32.mrb[0].mxu0
  %1909 = vmatprep.mubr.f32.mxu0 0.0
  %1910 = vmatmul.mubr.f32.gmra.mrb[0].mxu0 %v1640
  %v1911 = vpop.f32.mrb[0].mxu0
  %v1912 = vadd.f32 0.0, %v1911
  %v1913 = vpop.f32.mrb[0].mxu0
  %1914 = vmatprep.mubr.f32.mxu0 0.0
  %1915 = vmatmul.mubr.f32.gmra.mrb[0].mxu0 %v1643
  %v1916 = vpop.f32.mrb[0].mxu0
  %v1917 = vadd.f32 0.0, %v1916
  %v1918 = vpop.f32.mrb[0].mxu0
  %1919 = vmatprep.mubr.f32.mxu0 0.0
  %1920 = vmatmul.mubr.f32.gmra.mrb[0].mxu0 %v1646
  %v1921 = vpop.f32.mrb[0].mxu0
  %v1922 = vadd.f32 0.0, %v1921
  %v1923 = vpop.f32.mrb[0].mxu0
  %1924 = vmatprep.mubr.f32.mxu0 0.0
  %1925 = vmatmul.mubr.f32.gmra.mrb[0].mxu0 %v1649
  %v1926 = vpop.f32.mrb[0].mxu0
  %v1927 = vadd.f32 0.0, %v1926
  %v1928 = vpop.f32.mrb[0].mxu0
  %1929 = vmatprep.mubr.f32.mxu0 0.0
  %1930 = vmatmul.mubr.f32.gmra.mrb[0].mxu0 %v1652
  %v1931 = vpop.f32.mrb[0].mxu0
  %v1932 = vadd.f32 0.0, %v1931
  %v1933 = vpop.f32.mrb[0].mxu0
  %1934 = vmatprep.mubr.f32.mxu0 0.0
  %1935 = vmatmul.mubr.f32.gmra.mrb[0].mxu0 %v1655
  %v1936 = vpop.f32.mrb[0].mxu0
  %v1937 = vadd.f32 0.0, %v1936
  %v1938 = vpop.f32.mrb[0].mxu0
  %1939 = vmatprep.mubr.f32.mxu0 0.0
  %1940 = vmatmul.mubr.f32.gmra.mrb[0].mxu0 %v1658
  %v1941 = vpop.f32.mrb[0].mxu0
  %v1942 = vadd.f32 0.0, %v1941
  %v1943 = vpop.f32.mrb[0].mxu0
  %1944 = vmatprep.mubr.f32.mxu0 0.0
  %1945 = vmatmul.mubr.f32.gmra.mrb[0].mxu0 %v1661
  %v1946 = vpop.f32.mrb[0].mxu0
  %v1947 = vadd.f32 0.0, %v1946
  %v1948 = vpop.f32.mrb[0].mxu0
  %1949 = vmatprep.mubr.f32.mxu0 0.0
  %1950 = vmatmul.mubr.f32.gmra.mrb[0].mxu0 %v1664
  %v1951 = vpop.f32.mrb[0].mxu0
  %v1952 = vadd.f32 0.0, %v1951
  %v1953 = vpop.f32.mrb[0].mxu0
  %1954 = vmatprep.mubr.f32.mxu0 0.0
  %1955 = vmatmul.mubr.f32.gmra.mrb[0].mxu0 %v1667
  %v1956 = vpop.f32.mrb[0].mxu0
  %v1957 = vadd.f32 0.0, %v1956
  %v1958 = vpop.f32.mrb[0].mxu0
  %1959 = vmatprep.mubr.f32.mxu0 0.0
  %1960 = vmatmul.mubr.f32.gmra.mrb[0].mxu0 %v1670
  %v1961 = vpop.f32.mrb[0].mxu0
  %v1962 = vadd.f32 0.0, %v1961
  %v1963 = vpop.f32.mrb[0].mxu0
  %1964 = vmatprep.mubr.f32.mxu0 0.0
  %1965 = vmatmul.mubr.f32.gmra.mrb[0].mxu0 %v1673
  %v1966 = vpop.f32.mrb[0].mxu0
  %v1967 = vadd.f32 0.0, %v1966
  %v1968 = vpop.f32.mrb[0].mxu0
  %1969 = vmatprep.mubr.f32.mxu0 0.0
  %1970 = vmatmul.mubr.f32.gmra.mrb[0].mxu0 %v1676
  %v1971 = vpop.f32.mrb[0].mxu0
  %v1972 = vadd.f32 0.0, %v1971
  %v1973 = vpop.f32.mrb[0].mxu0
  %1974 = vmatprep.mubr.f32.mxu0 0.0
  %1975 = vmatmul.mubr.f32.gmra.mrb[0].mxu0 %v1679
  %v1976 = vpop.f32.mrb[0].mxu0
  %v1977 = vadd.f32 0.0, %v1976
  %v1978 = vpop.f32.mrb[0].mxu0
  %1979 = vmatprep.mubr.f32.mxu0 0.0
  %1980 = vmatmul.mubr.f32.gmra.mrb[0].mxu0 %v1682
  %v1981 = vpop.f32.mrb[0].mxu0
  %v1982 = vadd.f32 0.0, %v1981
  %v1983 = vpop.f32.mrb[0].mxu0
  %1984 = vmatprep.mubr.f32.mxu0 0.0
  %1985 = vmatmul.mubr.f32.gmra.mrb[0].mxu0 %v1685
  %v1986 = vpop.f32.mrb[0].mxu0
  %v1987 = vadd.f32 0.0, %v1986
  %v1988 = vpop.f32.mrb[0].mxu0
  %1989 = vmatprep.mubr.f32.mxu0 0.0
  %1990 = vmatmul.mubr.f32.gmra.mrb[0].mxu0 %v1688
  %v1991 = vpop.f32.mrb[0].mxu0
  %v1992 = vadd.f32 0.0, %v1991
  %v1993 = vpop.f32.mrb[0].mxu0
  %1994 = vmatprep.mubr.f32.mxu0 0.0
  %1995 = vmatmul.mubr.f32.gmra.mrb[0].mxu0 %v1691
  %v1996 = vpop.f32.mrb[0].mxu0
  %v1997 = vadd.f32 0.0, %v1996
  %v1998 = vpop.f32.mrb[0].mxu0
  %1999 = vmatprep.mubr.f32.mxu0 0.0
  %2000 = vmatmul.mubr.f32.gmra.mrb[0].mxu0 %v1694
  %v2001 = vpop.f32.mrb[0].mxu0
  %v2002 = vadd.f32 0.0, %v2001
  %v2003 = vpop.f32.mrb[0].mxu0
  %2004 = vmatprep.mubr.f32.mxu0 0.0
  %2005 = vmatmul.mubr.f32.gmra.mrb[0].mxu0 %v1697
  %v2006 = vpop.f32.mrb[0].mxu0
  %v2007 = vadd.f32 0.0, %v2006
  %v2008 = vpop.f32.mrb[0].mxu0
  %2009 = vmatprep.mubr.f32.mxu0 0.0
  %2010 = vmatmul.mubr.f32.gmra.mrb[0].mxu0 %v1700
  %v2011 = vpop.f32.mrb[0].mxu0
  %v2012 = vadd.f32 0.0, %v2011
  %v2013 = vpop.f32.mrb[0].mxu0
  %2014 = vmatprep.mubr.f32.mxu0 0.0
  %2015 = vmatmul.mubr.f32.gmra.mrb[0].mxu0 %v1703
  %v2016 = vpop.f32.mrb[0].mxu0
  %v2017 = vadd.f32 0.0, %v2016
  %v2018 = vpop.f32.mrb[0].mxu0
  %2019 = vmatprep.mubr.f32.mxu0 0.0
  %2020 = vmatmul.mubr.f32.gmra.mrb[0].mxu0 %v1706
  %v2021 = vpop.f32.mrb[0].mxu0
  %v2022 = vadd.f32 0.0, %v2021
  %v2023 = vpop.f32.mrb[0].mxu0
  %2024 = vmatprep.mubr.f32.mxu0 0.0
  %2025 = vmatmul.mubr.f32.gmra.mrb[0].mxu0 %v1709
  %v2026 = vpop.f32.mrb[0].mxu0
  %v2027 = vadd.f32 0.0, %v2026
  %v2028 = vpop.f32.mrb[0].mxu0
  %2029 = vmatprep.mubr.f32.mxu0 0.0
  %2030 = vmatmul.mubr.f32.gmra.mrb[0].mxu0 %v1712
  %v2031 = vpop.f32.mrb[0].mxu0
  %v2032 = vadd.f32 0.0, %v2031
  %v2033 = vpop.f32.mrb[0].mxu0
  %2034 = vmatprep.mubr.f32.mxu0 0.0
  %2035 = vmatmul.mubr.f32.gmra.mrb[0].mxu0 %v1715
  %v2036 = vpop.f32.mrb[0].mxu0
  %v2037 = vadd.f32 0.0, %v2036
  %v2038 = vpop.f32.mrb[0].mxu0
  %2039 = vmatprep.mubr.f32.mxu0 0.0
  %2040 = vmatmul.mubr.f32.gmra.mrb[0].mxu0 %v1718
  %v2041 = vpop.f32.mrb[0].mxu0
  %v2042 = vadd.f32 0.0, %v2041
  %v2043 = vpop.f32.mrb[0].mxu0
  %2044 = vmatprep.mubr.f32.mxu0 0.0
  %2045 = vmatmul.mubr.f32.gmra.mrb[0].mxu0 %v1721
  %v2046 = vpop.f32.mrb[0].mxu0
  %v2047 = vadd.f32 0.0, %v2046
  %v2048 = vpop.f32.mrb[0].mxu0
  %2049 = vmatprep.mubr.f32.mxu0 0.0
  %2050 = vmatmul.mubr.f32.gmra.mrb[0].mxu0 %v1724
  %v2051 = vpop.f32.mrb[0].mxu0
  %v2052 = vadd.f32 0.0, %v2051
  %v2053 = vpop.f32.mrb[0].mxu0
  %2054 = vmatprep.mubr.f32.mxu0 0.0
  %2055 = vmatmul.mubr.f32.gmra.mrb[0].mxu0 %v1727
  %v2056 = vpop.f32.mrb[0].mxu0
  %v2057 = vadd.f32 0.0, %v2056
  %v2058 = vpop.f32.mrb[0].mxu0
  %2059 = vmatprep.mubr.f32.mxu0 0.0
  %2060 = vmatmul.mubr.f32.gmra.mrb[0].mxu0 %v1730
  %v2061 = vpop.f32.mrb[0].mxu0
  %v2062 = vadd.f32 0.0, %v2061
  %v2063 = vpop.f32.mrb[0].mxu0
  %2064 = vmatprep.mubr.f32.mxu0 0.0
  %2065 = vmatmul.mubr.f32.gmra.mrb[0].mxu0 %v1733
  %v2066 = vpop.f32.mrb[0].mxu0
  %v2067 = vadd.f32 0.0, %v2066
  %v2068 = vpop.f32.mrb[0].mxu0
  %2069 = vmatprep.mubr.f32.mxu0 0.0
  %2070 = vmatmul.mubr.f32.gmra.mrb[0].mxu0 %v1736
  %v2071 = vpop.f32.mrb[0].mxu0
  %v2072 = vadd.f32 0.0, %v2071
  %v2073 = vpop.f32.mrb[0].mxu0
  %2074 = vmatprep.mubr.f32.mxu0 0.0
  %2075 = vmatmul.mubr.f32.gmra.mrb[0].mxu0 %v1739
  %v2076 = vpop.f32.mrb[0].mxu0
  %v2077 = vadd.f32 0.0, %v2076
  %v2078 = vpop.f32.mrb[0].mxu0
  %2079 = vmatprep.mubr.f32.mxu0 0.0
  %2080 = vmatmul.mubr.f32.gmra.mrb[0].mxu0 %v1742
  %v2081 = vpop.f32.mrb[0].mxu0
  %v2082 = vadd.f32 0.0, %v2081
  %v2083 = vpop.f32.mrb[0].mxu0
  %2084 = vmatprep.mubr.f32.mxu0 0.0
  %2085 = vmatmul.mubr.f32.gmra.mrb[0].mxu0 %v1745
  %v2086 = vpop.f32.mrb[0].mxu0
  %v2087 = vadd.f32 0.0, %v2086
  %v2088 = vpop.f32.mrb[0].mxu0
  %2089 = vmatprep.mubr.f32.mxu0 0.0
  %2090 = vmatmul.mubr.f32.gmra.mrb[0].mxu0 %v1748
  %v2091 = vpop.f32.mrb[0].mxu0
  %v2092 = vadd.f32 0.0, %v2091
  %v2093 = vpop.f32.mrb[0].mxu0
  %2094 = vmatprep.mubr.f32.mxu0 0.0
  %2095 = vmatmul.mubr.f32.gmra.mrb[0].mxu0 %v1751
  %v2096 = vpop.f32.mrb[0].mxu0
  %v2097 = vadd.f32 0.0, %v2096
  %v2098 = vpop.f32.mrb[0].mxu0
  %2099 = vmatprep.mubr.f32.mxu0 0.0
  %2100 = vmatmul.mubr.f32.gmra.mrb[0].mxu0 %v1754
  %v2101 = vpop.f32.mrb[0].mxu0
  %v2102 = vadd.f32 0.0, %v2101
  %v2103 = vpop.f32.mrb[0].mxu0
  %2104 = vmatprep.mubr.f32.mxu0 0.0
  %2105 = vmatmul.mubr.f32.gmra.mrb[0].mxu0 %v1757
  %v2106 = vpop.f32.mrb[0].mxu0
  %v2107 = vadd.f32 0.0, %v2106
  %v2108 = vpop.f32.mrb[0].mxu0
  %2109 = vmatprep.mubr.f32.mxu0 0.0
  %2110 = vmatmul.mubr.f32.gmra.mrb[0].mxu0 %v1760
  %v2111 = vpop.f32.mrb[0].mxu0
  %v2112 = vadd.f32 0.0, %v2111
  %v2113 = vpop.f32.mrb[0].mxu0
  %2114 = vmatprep.mubr.f32.mxu0 0.0
  %2115 = vmatmul.mubr.f32.gmra.mrb[0].mxu0 %v1763
  %v2116 = vpop.f32.mrb[0].mxu0
  %v2117 = vadd.f32 0.0, %v2116
  %v2118 = vpop.f32.mrb[0].mxu0
  %2119 = vmatprep.mubr.f32.mxu0 0.0
  %2120 = vmatmul.mubr.f32.gmra.mrb[0].mxu0 %v1766
  %v2121 = vpop.f32.mrb[0].mxu0
  %v2122 = vadd.f32 0.0, %v2121
  %v2123 = vpop.f32.mrb[0].mxu0
  %2124 = vmatprep.mubr.f32.mxu0 0.0
  %2125 = vmatmul.mubr.f32.gmra.mrb[0].mxu0 %v1769
  %v2126 = vpop.f32.mrb[0].mxu0
  %v2127 = vadd.f32 0.0, %v2126
  %v2128 = vpop.f32.mrb[0].mxu0
  %2129 = vmatprep.mubr.f32.mxu0 0.0
  %2130 = vmatmul.mubr.f32.gmra.mrb[0].mxu0 %v1772
  %v2131 = vpop.f32.mrb[0].mxu0
  %v2132 = vadd.f32 0.0, %v2131
  %v2133 = vpop.f32.mrb[0].mxu0
  %2134 = vmatprep.mubr.f32.mxu0 0.0
  %2135 = vmatmul.mubr.f32.gmra.mrb[0].mxu0 %v1775
  %v2136 = vpop.f32.mrb[0].mxu0
  %v2137 = vadd.f32 0.0, %v2136
  %v2138 = vpop.f32.mrb[0].mxu0
  %2139 = vmatprep.mubr.f32.mxu0 0.0
  %2140 = vmatmul.mubr.f32.gmra.mrb[0].mxu0 %v1778
  %v2141 = vpop.f32.mrb[0].mxu0
  %v2142 = vadd.f32 0.0, %v2141
  %v2143 = vpop.f32.mrb[0].mxu0
  %2144 = vmatprep.mubr.f32.mxu0 0.0
  %2145 = vmatmul.mubr.f32.gmra.mrb[0].mxu0 %v1781
  %v2146 = vpop.f32.mrb[0].mxu0
  %v2147 = vadd.f32 0.0, %v2146
  %v2148 = vpop.f32.mrb[0].mxu0
  %2149 = vmatprep.mubr.f32.mxu0 0.0
  %2150 = vmatmul.mubr.f32.gmra.mrb[0].mxu0 %v1784
  %v2151 = vpop.f32.mrb[0].mxu0
  %v2152 = vadd.f32 0.0, %v2151
  %v2153 = vpop.f32.mrb[0].mxu0
  %2154 = vmatprep.mubr.f32.mxu0 0.0
  %2155 = vmatmul.mubr.f32.gmra.mrb[0].mxu0 %v1787
  %v2156 = vpop.f32.mrb[0].mxu0
  %v2157 = vadd.f32 0.0, %v2156
  %v2158 = vpop.f32.mrb[0].mxu0
  %2159 = vmatprep.mubr.f32.mxu0 0.0
  %2160 = vmatmul.mubr.f32.gmra.mrb[0].mxu0 %v1790
  %v2161 = vpop.f32.mrb[0].mxu0
  %v2162 = vadd.f32 0.0, %v2161
  %v2163 = vpop.f32.mrb[0].mxu0
  %2164 = vmatprep.mubr.f32.mxu0 0.0
  %2165 = vmatmul.mubr.f32.gmra.mrb[0].mxu0 %v1793
  %v2166 = vpop.f32.mrb[0].mxu0
  %v2167 = vadd.f32 0.0, %v2166
  %v2168 = vpop.f32.mrb[0].mxu0
  %2169 = vmatprep.mubr.f32.mxu0 0.0
  %2170 = vmatmul.mubr.f32.gmra.mrb[0].mxu0 %v1796
  %v2171 = vpop.f32.mrb[0].mxu0
  %v2172 = vadd.f32 0.0, %v2171
  %v2173 = vpop.f32.mrb[0].mxu0
  %2174 = vmatprep.mubr.f32.mxu0 0.0
  %2175 = vmatmul.mubr.f32.gmra.mrb[0].mxu0 %v1799
  %v2176 = vpop.f32.mrb[0].mxu0
  %v2177 = vadd.f32 0.0, %v2176
  %v2178 = vpop.f32.mrb[0].mxu0
  %2179 = vmatprep.mubr.f32.mxu0 0.0
  %2180 = vmatmul.mubr.f32.gmra.mrb[0].mxu0 %v1802
  %v2181 = vpop.f32.mrb[0].mxu0
  %v2182 = vadd.f32 0.0, %v2181
  %v2183 = vpop.f32.mrb[0].mxu0
  %2184 = vmatprep.mubr.f32.mxu0 0.0
  %2185 = vmatmul.mubr.f32.gmra.mrb[0].mxu0 %v1805
  %v2186 = vpop.f32.mrb[0].mxu0
  %v2187 = vadd.f32 0.0, %v2186
  %v2188 = vpop.f32.mrb[0].mxu0
  %2189 = vmatprep.mubr.f32.mxu0 0.0
  %2190 = vmatmul.mubr.f32.gmra.mrb[0].mxu0 %v1808
  %v2191 = vpop.f32.mrb[0].mxu0
  %v2192 = vadd.f32 0.0, %v2191
  %v2193 = vpop.f32.mrb[0].mxu0
  %2194 = vdwg.mxu0
  %v2195 = vadd.f32 %v1235, %v1877
  %v2196 = vadd.f32 %v1240, %v1882
  %v2197 = vadd.f32 %v1245, %v1887
  %v2198 = vadd.f32 %v1250, %v1892
  %v2199 = vadd.f32 %v1255, %v1897
  %v2200 = vadd.f32 %v1260, %v1902
  %v2201 = vadd.f32 %v1265, %v1907
  %v2202 = vadd.f32 %v1270, %v1912
  %v2203 = vadd.f32 %v1275, %v1917
  %v2204 = vadd.f32 %v1280, %v1922
  %v2205 = vadd.f32 %v1285, %v1927
  %v2206 = vadd.f32 %v1290, %v1932
  %v2207 = vadd.f32 %v1295, %v1937
  %v2208 = vadd.f32 %v1300, %v1942
  %v2209 = vadd.f32 %v1305, %v1947
  %v2210 = vadd.f32 %v1310, %v1952
  %v2211 = vadd.f32 %v1315, %v1957
  %v2212 = vadd.f32 %v1320, %v1962
  %v2213 = vadd.f32 %v1325, %v1967
  %v2214 = vadd.f32 %v1330, %v1972
  %v2215 = vadd.f32 %v1335, %v1977
  %v2216 = vadd.f32 %v1340, %v1982
  %v2217 = vadd.f32 %v1345, %v1987
  %v2218 = vadd.f32 %v1350, %v1992
  %v2219 = vadd.f32 %v1355, %v1997
  %v2220 = vadd.f32 %v1360, %v2002
  %v2221 = vadd.f32 %v1365, %v2007
  %v2222 = vadd.f32 %v1370, %v2012
  %v2223 = vadd.f32 %v1375, %v2017
  %v2224 = vadd.f32 %v1380, %v2022
  %v2225 = vadd.f32 %v1385, %v2027
  %v2226 = vadd.f32 %v1390, %v2032
  %v2227 = vadd.f32 %v1395, %v2037
  %v2228 = vadd.f32 %v1400, %v2042
  %v2229 = vadd.f32 %v1405, %v2047
  %v2230 = vadd.f32 %v1410, %v2052
  %v2231 = vadd.f32 %v1415, %v2057
  %v2232 = vadd.f32 %v1420, %v2062
  %v2233 = vadd.f32 %v1425, %v2067
  %v2234 = vadd.f32 %v1430, %v2072
  %v2235 = vadd.f32 %v1435, %v2077
  %v2236 = vadd.f32 %v1440, %v2082
  %v2237 = vadd.f32 %v1445, %v2087
  %v2238 = vadd.f32 %v1450, %v2092
  %v2239 = vadd.f32 %v1455, %v2097
  %v2240 = vadd.f32 %v1460, %v2102
  %v2241 = vadd.f32 %v1465, %v2107
  %v2242 = vadd.f32 %v1470, %v2112
  %v2243 = vadd.f32 %v1475, %v2117
  %v2244 = vadd.f32 %v1480, %v2122
  %v2245 = vadd.f32 %v1485, %v2127
  %v2246 = vadd.f32 %v1490, %v2132
  %v2247 = vadd.f32 %v1495, %v2137
  %v2248 = vadd.f32 %v1500, %v2142
  %v2249 = vadd.f32 %v1505, %v2147
  %v2250 = vadd.f32 %v1510, %v2152
  %v2251 = vadd.f32 %v1515, %v2157
  %v2252 = vadd.f32 %v1520, %v2162
  %v2253 = vadd.f32 %v1525, %v2167
  %v2254 = vadd.f32 %v1530, %v2172
  %v2255 = vadd.f32 %v1535, %v2177
  %v2256 = vadd.f32 %v1540, %v2182
  %v2257 = vadd.f32 %v1545, %v2187
  %v2258 = vadd.f32 %v1550, %v2192
  %v2259 = vld [vmem:[%s202] sm:$0xff]
  %v2260 = vld [vmem:[%s202 + $0x8] sm:$0xff]
  %v2261 = vld [vmem:[%s202 + $0x18] sm:$0xff]
  %v2262 = vld [vmem:[%s202 + $0x20] sm:$0xff]
  %v2263 = vld [vmem:[%s202 + $0x30] sm:$0xff]
  %v2264 = vld [vmem:[%s202 + $0x38] sm:$0xff]
  %v2265 = vld [vmem:[%s202 + $0x48] sm:$0xff]
  %v2266 = vld [vmem:[%s202 + $0x50] sm:$0xff]
  %v2267 = vld [vmem:[%s202 + $0x60] sm:$0xff]
  %v2268 = vld [vmem:[%s202 + $0x68] sm:$0xff]
  %v2269 = vld [vmem:[%s202 + $0x78] sm:$0xff]
  %v2270 = vld [vmem:[%s202 + $0x80] sm:$0xff]
  %v2271 = vld [vmem:[%s202 + $0x90] sm:$0xff]
  %v2272 = vld [vmem:[%s202 + $0x98] sm:$0xff]
  %v2273 = vld [vmem:[%s202 + $0xa8] sm:$0xff]
  %v2274 = vld [vmem:[%s202 + $0xb0] sm:$0xff]
  %v2275 = vld [vmem:[%s202 + $0xc0] sm:$0xff]
  %v2276 = vld [vmem:[%s202 + $0xc8] sm:$0xff]
  %v2277 = vld [vmem:[%s202 + $0xd8] sm:$0xff]
  %v2278 = vld [vmem:[%s202 + $0xe0] sm:$0xff]
  %v2279 = vld [vmem:[%s202 + $0xf0] sm:$0xff]
  %v2280 = vld [vmem:[%s202 + $0xf8] sm:$0xff]
  %v2281 = vld [vmem:[%s202 + $0x108] sm:$0xff]
  %v2282 = vld [vmem:[%s202 + $0x110] sm:$0xff]
  %v2283 = vld [vmem:[%s202 + $0x120] sm:$0xff]
  %v2284 = vld [vmem:[%s202 + $0x128] sm:$0xff]
  %v2285 = vld [vmem:[%s202 + $0x138] sm:$0xff]
  %v2286 = vld [vmem:[%s202 + $0x140] sm:$0xff]
  %v2287 = vld [vmem:[%s202 + $0x150] sm:$0xff]
  %v2288 = vld [vmem:[%s202 + $0x158] sm:$0xff]
  %v2289 = vld [vmem:[%s202 + $0x168] sm:$0xff]
  %v2290 = vld [vmem:[%s202 + $0x170] sm:$0xff]
  %v2291 = vld [vmem:[%s202 + $0x1b0] sm:$0xff]
  %v2292 = vld [vmem:[%s202 + $0x1b8] sm:$0xff]
  %v2293 = vld [vmem:[%s202 + $0x1c8] sm:$0xff]
  %v2294 = vld [vmem:[%s202 + $0x1d0] sm:$0xff]
  %v2295 = vld [vmem:[%s202 + $0x1e0] sm:$0xff]
  %v2296 = vld [vmem:[%s202 + $0x1e8] sm:$0xff]
  %v2297 = vld [vmem:[%s202 + $0x1f8] sm:$0xff]
  %v2298 = vld [vmem:[%s202 + $0x200] sm:$0xff]
  %v2299 = vld [vmem:[%s202 + $0x210] sm:$0xff]
  %v2300 = vld [vmem:[%s202 + $0x218] sm:$0xff]
  %v2301 = vld [vmem:[%s202 + $0x228] sm:$0xff]
  %v2302 = vld [vmem:[%s202 + $0x230] sm:$0xff]
  %v2303 = vld [vmem:[%s202 + $0x240] sm:$0xff]
  %v2304 = vld [vmem:[%s202 + $0x248] sm:$0xff]
  %v2305 = vld [vmem:[%s202 + $0x258] sm:$0xff]
  %v2306 = vld [vmem:[%s202 + $0x260] sm:$0xff]
  %v2307 = vld [vmem:[%s202 + $0x270] sm:$0xff]
  %v2308 = vld [vmem:[%s202 + $0x278] sm:$0xff]
  %v2309 = vld [vmem:[%s202 + $0x288] sm:$0xff]
  %v2310 = vld [vmem:[%s202 + $0x290] sm:$0xff]
  %v2311 = vld [vmem:[%s202 + $0x2a0] sm:$0xff]
  %v2312 = vld [vmem:[%s202 + $0x2a8] sm:$0xff]
  %v2313 = vld [vmem:[%s202 + $0x2b8] sm:$0xff]
  %v2314 = vld [vmem:[%s202 + $0x2c0] sm:$0xff]
  %v2315 = vld [vmem:[%s202 + $0x2d0] sm:$0xff]
  %v2316 = vld [vmem:[%s202 + $0x2d8] sm:$0xff]
  %v2317 = vld [vmem:[%s202 + $0x2e8] sm:$0xff]
  %v2318 = vld [vmem:[%s202 + $0x2f0] sm:$0xff]
  %v2319 = vld [vmem:[%s202 + $0x300] sm:$0xff]
  %v2320 = vld [vmem:[%s202 + $0x308] sm:$0xff]
  %v2321 = vld [vmem:[%s202 + $0x318] sm:$0xff]
  %v2322 = vld [vmem:[%s202 + $0x320] sm:$0xff]
  %v2323 = vld [vmem:[%s1 + $0x18] sm:$0xff]
  %v2325 = vsel %vm28, %v2259, 0
  %v2328 = vsel %vm28, %v2260, 0
  %v2331 = vsel %vm28, %v2261, 0
  %v2334 = vsel %vm28, %v2262, 0
  %v2337 = vsel %vm28, %v2263, 0
  %v2340 = vsel %vm28, %v2264, 0
  %v2343 = vsel %vm28, %v2265, 0
  %v2346 = vsel %vm28, %v2266, 0
  %v2349 = vsel %vm28, %v2267, 0
  %v2352 = vsel %vm28, %v2268, 0
  %v2355 = vsel %vm28, %v2269, 0
  %v2358 = vsel %vm28, %v2270, 0
  %v2361 = vsel %vm28, %v2271, 0
  %v2364 = vsel %vm28, %v2272, 0
  %v2367 = vsel %vm28, %v2273, 0
  %v2370 = vsel %vm28, %v2274, 0
  %v2373 = vsel %vm28, %v2275, 0
  %v2376 = vsel %vm28, %v2276, 0
  %v2379 = vsel %vm28, %v2277, 0
  %v2382 = vsel %vm28, %v2278, 0
  %v2385 = vsel %vm28, %v2279, 0
  %v2388 = vsel %vm28, %v2280, 0
  %v2391 = vsel %vm28, %v2281, 0
  %v2394 = vsel %vm28, %v2282, 0
  %v2397 = vsel %vm28, %v2283, 0
  %v2400 = vsel %vm28, %v2284, 0
  %v2403 = vsel %vm28, %v2285, 0
  %v2406 = vsel %vm28, %v2286, 0
  %v2409 = vsel %vm28, %v2287, 0
  %v2412 = vsel %vm28, %v2288, 0
  %v2415 = vsel %vm28, %v2289, 0
  %v2418 = vsel %vm28, %v2290, 0
  %v2421 = vsel %vm28, %v2291, 0
  %v2424 = vsel %vm28, %v2292, 0
  %v2427 = vsel %vm28, %v2293, 0
  %v2430 = vsel %vm28, %v2294, 0
  %v2433 = vsel %vm28, %v2295, 0
  %v2436 = vsel %vm28, %v2296, 0
  %v2439 = vsel %vm28, %v2297, 0
  %v2442 = vsel %vm28, %v2298, 0
  %v2445 = vsel %vm28, %v2299, 0
  %v2448 = vsel %vm28, %v2300, 0
  %v2451 = vsel %vm28, %v2301, 0
  %v2454 = vsel %vm28, %v2302, 0
  %v2457 = vsel %vm28, %v2303, 0
  %v2460 = vsel %vm28, %v2304, 0
  %v2463 = vsel %vm28, %v2305, 0
  %v2466 = vsel %vm28, %v2306, 0
  %v2469 = vsel %vm28, %v2307, 0
  %v2472 = vsel %vm28, %v2308, 0
  %v2475 = vsel %vm28, %v2309, 0
  %v2478 = vsel %vm28, %v2310, 0
  %v2481 = vsel %vm28, %v2311, 0
  %v2484 = vsel %vm28, %v2312, 0
  %v2487 = vsel %vm28, %v2313, 0
  %v2490 = vsel %vm28, %v2314, 0
  %v2493 = vsel %vm28, %v2315, 0
  %v2496 = vsel %vm28, %v2316, 0
  %v2499 = vsel %vm28, %v2317, 0
  %v2502 = vsel %vm28, %v2318, 0
  %v2505 = vsel %vm28, %v2319, 0
  %v2508 = vsel %vm28, %v2320, 0
  %v2511 = vsel %vm28, %v2321, 0
  %v2514 = vsel %vm28, %v2322, 0
  %2516 = vmatprep.subr.mxu0 0.0
  %2517 = vmatpush1.msra.mxu0 %v2323
  %2518 = vmatprep.subr.mxu0 0.0
  %2519 = vmatpush1.msra.mxu0 0.0
  %2520 = vmatprep.subr.mxu0 0.0
  %2521 = vmatpush1.msra.mxu0 0.0
  %2522 = vmatprep.subr.mxu0 0.0
  %2523 = vmatpush1.msra.mxu0 0.0
  %2524 = vmatprep.subr.mxu0 0.0
  %2525 = vmatpush1.msra.mxu0 0.0
  %2526 = vmatprep.subr.mxu0 0.0
  %2527 = vmatpush1.msra.mxu0 0.0
  %2528 = vmatprep.subr.mxu0 0.0
  %2529 = vmatpush1.msra.mxu0 0.0
  %2530 = vmatprep.subr.mxu0 0.0
  %2531 = vmatpush1.msra.mxu0 0.0
  %2532 = vmatprep.subr.mxu0 0.0
  %2533 = vmatpush1.msra.mxu0 0.0
  %2534 = vmatprep.subr.mxu0 0.0
  %2535 = vmatpush1.msra.mxu0 0.0
  %2536 = vmatprep.subr.mxu0 0.0
  %2537 = vmatpush1.msra.mxu0 0.0
  %2538 = vmatprep.subr.mxu0 0.0
  %2539 = vmatpush1.msra.mxu0 0.0
  %2540 = vmatprep.subr.mxu0 0.0
  %2541 = vmatpush1.msra.mxu0 0.0
  %2542 = vmatprep.subr.mxu0 0.0
  %2543 = vmatpush1.msra.mxu0 0.0
  %2544 = vmatprep.subr.mxu0 0.0
  %2545 = vmatpush1.msra.mxu0 0.0
  %2546 = vmatprep.subr.mxu0 0.0
  %2547 = vmatpush1.msra.mxu0 0.0
  %2548 = vmatprep.subr.mxu0 0.0
  %2549 = vmatpush1.msra.mxu0 0.0
  %2550 = vmatprep.subr.mxu0 0.0
  %2551 = vmatpush1.msra.mxu0 0.0
  %2552 = vmatprep.subr.mxu0 0.0
  %2553 = vmatpush1.msra.mxu0 0.0
  %2554 = vmatprep.subr.mxu0 0.0
  %2555 = vmatpush1.msra.mxu0 0.0
  %2556 = vmatprep.subr.mxu0 0.0
  %2557 = vmatpush1.msra.mxu0 0.0
  %2558 = vmatprep.subr.mxu0 0.0
  %2559 = vmatpush1.msra.mxu0 0.0
  %2560 = vmatprep.subr.mxu0 0.0
  %2561 = vmatpush1.msra.mxu0 0.0
  %2562 = vmatprep.subr.mxu0 0.0
  %2563 = vmatpush1.msra.mxu0 0.0
  %2564 = vmatprep.subr.mxu0 0.0
  %2565 = vmatpush1.msra.mxu0 0.0
  %2566 = vmatprep.subr.mxu0 0.0
  %2567 = vmatpush1.msra.mxu0 0.0
  %2568 = vmatprep.subr.mxu0 0.0
  %2569 = vmatpush1.msra.mxu0 0.0
  %2570 = vmatprep.subr.mxu0 0.0
  %2571 = vmatpush1.msra.mxu0 0.0
  %2572 = vmatprep.subr.mxu0 0.0
  %2573 = vmatpush1.msra.mxu0 0.0
  %2574 = vmatprep.subr.mxu0 0.0
  %2575 = vmatpush1.msra.mxu0 0.0
  %2576 = vmatprep.subr.mxu0 0.0
  %2577 = vmatpush1.msra.mxu0 0.0
  %2578 = vmatprep.subr.mxu0 0.0
  %2579 = vmatpush1.msra.mxu0 0.0
  %2580 = vmatprep.mubr.f32.mxu0 0.0
  %2581 = vmatmul.mubr.f32.gmra.mrb[0].mxu0 %v2325
  %v2582 = vpop.f32.mrb[0].mxu0
  %v2583 = vadd.f32 0.0, %v2582
  %v2584 = vpop.f32.mrb[0].mxu0
  %2585 = vmatprep.mubr.f32.mxu0 0.0
  %2586 = vmatmul.mubr.f32.gmra.mrb[0].mxu0 %v2328
  %v2587 = vpop.f32.mrb[0].mxu0
  %v2588 = vadd.f32 0.0, %v2587
  %v2589 = vpop.f32.mrb[0].mxu0
  %2590 = vmatprep.mubr.f32.mxu0 0.0
  %2591 = vmatmul.mubr.f32.gmra.mrb[0].mxu0 %v2331
  %v2592 = vpop.f32.mrb[0].mxu0
  %v2593 = vadd.f32 0.0, %v2592
  %v2594 = vpop.f32.mrb[0].mxu0
  %2595 = vmatprep.mubr.f32.mxu0 0.0
  %2596 = vmatmul.mubr.f32.gmra.mrb[0].mxu0 %v2334
  %v2597 = vpop.f32.mrb[0].mxu0
  %v2598 = vadd.f32 0.0, %v2597
  %v2599 = vpop.f32.mrb[0].mxu0
  %2600 = vmatprep.mubr.f32.mxu0 0.0
  %2601 = vmatmul.mubr.f32.gmra.mrb[0].mxu0 %v2337
  %v2602 = vpop.f32.mrb[0].mxu0
  %v2603 = vadd.f32 0.0, %v2602
  %v2604 = vpop.f32.mrb[0].mxu0
  %2605 = vmatprep.mubr.f32.mxu0 0.0
  %2606 = vmatmul.mubr.f32.gmra.mrb[0].mxu0 %v2340
  %v2607 = vpop.f32.mrb[0].mxu0
  %v2608 = vadd.f32 0.0, %v2607
  %v2609 = vpop.f32.mrb[0].mxu0
  %2610 = vmatprep.mubr.f32.mxu0 0.0
  %2611 = vmatmul.mubr.f32.gmra.mrb[0].mxu0 %v2343
  %v2612 = vpop.f32.mrb[0].mxu0
  %v2613 = vadd.f32 0.0, %v2612
  %v2614 = vpop.f32.mrb[0].mxu0
  %2615 = vmatprep.mubr.f32.mxu0 0.0
  %2616 = vmatmul.mubr.f32.gmra.mrb[0].mxu0 %v2346
  %v2617 = vpop.f32.mrb[0].mxu0
  %v2618 = vadd.f32 0.0, %v2617
  %v2619 = vpop.f32.mrb[0].mxu0
  %2620 = vmatprep.mubr.f32.mxu0 0.0
  %2621 = vmatmul.mubr.f32.gmra.mrb[0].mxu0 %v2349
  %v2622 = vpop.f32.mrb[0].mxu0
  %v2623 = vadd.f32 0.0, %v2622
  %v2624 = vpop.f32.mrb[0].mxu0
  %2625 = vmatprep.mubr.f32.mxu0 0.0
  %2626 = vmatmul.mubr.f32.gmra.mrb[0].mxu0 %v2352
  %v2627 = vpop.f32.mrb[0].mxu0
  %v2628 = vadd.f32 0.0, %v2627
  %v2629 = vpop.f32.mrb[0].mxu0
  %2630 = vmatprep.mubr.f32.mxu0 0.0
  %2631 = vmatmul.mubr.f32.gmra.mrb[0].mxu0 %v2355
  %v2632 = vpop.f32.mrb[0].mxu0
  %v2633 = vadd.f32 0.0, %v2632
  %v2634 = vpop.f32.mrb[0].mxu0
  %2635 = vmatprep.mubr.f32.mxu0 0.0
  %2636 = vmatmul.mubr.f32.gmra.mrb[0].mxu0 %v2358
  %v2637 = vpop.f32.mrb[0].mxu0
  %v2638 = vadd.f32 0.0, %v2637
  %v2639 = vpop.f32.mrb[0].mxu0
  %2640 = vmatprep.mubr.f32.mxu0 0.0
  %2641 = vmatmul.mubr.f32.gmra.mrb[0].mxu0 %v2361
  %v2642 = vpop.f32.mrb[0].mxu0
  %v2643 = vadd.f32 0.0, %v2642
  %v2644 = vpop.f32.mrb[0].mxu0
  %2645 = vmatprep.mubr.f32.mxu0 0.0
  %2646 = vmatmul.mubr.f32.gmra.mrb[0].mxu0 %v2364
  %v2647 = vpop.f32.mrb[0].mxu0
  %v2648 = vadd.f32 0.0, %v2647
  %v2649 = vpop.f32.mrb[0].mxu0
  %2650 = vmatprep.mubr.f32.mxu0 0.0
  %2651 = vmatmul.mubr.f32.gmra.mrb[0].mxu0 %v2367
  %v2652 = vpop.f32.mrb[0].mxu0
  %v2653 = vadd.f32 0.0, %v2652
  %v2654 = vpop.f32.mrb[0].mxu0
  %2655 = vmatprep.mubr.f32.mxu0 0.0
  %2656 = vmatmul.mubr.f32.gmra.mrb[0].mxu0 %v2370
  %v2657 = vpop.f32.mrb[0].mxu0
  %v2658 = vadd.f32 0.0, %v2657
  %v2659 = vpop.f32.mrb[0].mxu0
  %2660 = vmatprep.mubr.f32.mxu0 0.0
  %2661 = vmatmul.mubr.f32.gmra.mrb[0].mxu0 %v2373
  %v2662 = vpop.f32.mrb[0].mxu0
  %v2663 = vadd.f32 0.0, %v2662
  %v2664 = vpop.f32.mrb[0].mxu0
  %2665 = vmatprep.mubr.f32.mxu0 0.0
  %2666 = vmatmul.mubr.f32.gmra.mrb[0].mxu0 %v2376
  %v2667 = vpop.f32.mrb[0].mxu0
  %v2668 = vadd.f32 0.0, %v2667
  %v2669 = vpop.f32.mrb[0].mxu0
  %2670 = vmatprep.mubr.f32.mxu0 0.0
  %2671 = vmatmul.mubr.f32.gmra.mrb[0].mxu0 %v2379
  %v2672 = vpop.f32.mrb[0].mxu0
  %v2673 = vadd.f32 0.0, %v2672
  %v2674 = vpop.f32.mrb[0].mxu0
  %2675 = vmatprep.mubr.f32.mxu0 0.0
  %2676 = vmatmul.mubr.f32.gmra.mrb[0].mxu0 %v2382
  %v2677 = vpop.f32.mrb[0].mxu0
  %v2678 = vadd.f32 0.0, %v2677
  %v2679 = vpop.f32.mrb[0].mxu0
  %2680 = vmatprep.mubr.f32.mxu0 0.0
  %2681 = vmatmul.mubr.f32.gmra.mrb[0].mxu0 %v2385
  %v2682 = vpop.f32.mrb[0].mxu0
  %v2683 = vadd.f32 0.0, %v2682
  %v2684 = vpop.f32.mrb[0].mxu0
  %2685 = vmatprep.mubr.f32.mxu0 0.0
  %2686 = vmatmul.mubr.f32.gmra.mrb[0].mxu0 %v2388
  %v2687 = vpop.f32.mrb[0].mxu0
  %v2688 = vadd.f32 0.0, %v2687
  %v2689 = vpop.f32.mrb[0].mxu0
  %2690 = vmatprep.mubr.f32.mxu0 0.0
  %2691 = vmatmul.mubr.f32.gmra.mrb[0].mxu0 %v2391
  %v2692 = vpop.f32.mrb[0].mxu0
  %v2693 = vadd.f32 0.0, %v2692
  %v2694 = vpop.f32.mrb[0].mxu0
  %2695 = vmatprep.mubr.f32.mxu0 0.0
  %2696 = vmatmul.mubr.f32.gmra.mrb[0].mxu0 %v2394
  %v2697 = vpop.f32.mrb[0].mxu0
  %v2698 = vadd.f32 0.0, %v2697
  %v2699 = vpop.f32.mrb[0].mxu0
  %2700 = vmatprep.mubr.f32.mxu0 0.0
  %2701 = vmatmul.mubr.f32.gmra.mrb[0].mxu0 %v2397
  %v2702 = vpop.f32.mrb[0].mxu0
  %v2703 = vadd.f32 0.0, %v2702
  %v2704 = vpop.f32.mrb[0].mxu0
  %2705 = vmatprep.mubr.f32.mxu0 0.0
  %2706 = vmatmul.mubr.f32.gmra.mrb[0].mxu0 %v2400
  %v2707 = vpop.f32.mrb[0].mxu0
  %v2708 = vadd.f32 0.0, %v2707
  %v2709 = vpop.f32.mrb[0].mxu0
  %2710 = vmatprep.mubr.f32.mxu0 0.0
  %2711 = vmatmul.mubr.f32.gmra.mrb[0].mxu0 %v2403
  %v2712 = vpop.f32.mrb[0].mxu0
  %v2713 = vadd.f32 0.0, %v2712
  %v2714 = vpop.f32.mrb[0].mxu0
  %2715 = vmatprep.mubr.f32.mxu0 0.0
  %2716 = vmatmul.mubr.f32.gmra.mrb[0].mxu0 %v2406
  %v2717 = vpop.f32.mrb[0].mxu0
  %v2718 = vadd.f32 0.0, %v2717
  %v2719 = vpop.f32.mrb[0].mxu0
  %2720 = vmatprep.mubr.f32.mxu0 0.0
  %2721 = vmatmul.mubr.f32.gmra.mrb[0].mxu0 %v2409
  %v2722 = vpop.f32.mrb[0].mxu0
  %v2723 = vadd.f32 0.0, %v2722
  %v2724 = vpop.f32.mrb[0].mxu0
  %2725 = vmatprep.mubr.f32.mxu0 0.0
  %2726 = vmatmul.mubr.f32.gmra.mrb[0].mxu0 %v2412
  %v2727 = vpop.f32.mrb[0].mxu0
  %v2728 = vadd.f32 0.0, %v2727
  %v2729 = vpop.f32.mrb[0].mxu0
  %2730 = vmatprep.mubr.f32.mxu0 0.0
  %2731 = vmatmul.mubr.f32.gmra.mrb[0].mxu0 %v2415
  %v2732 = vpop.f32.mrb[0].mxu0
  %v2733 = vadd.f32 0.0, %v2732
  %v2734 = vpop.f32.mrb[0].mxu0
  %2735 = vmatprep.mubr.f32.mxu0 0.0
  %2736 = vmatmul.mubr.f32.gmra.mrb[0].mxu0 %v2418
  %v2737 = vpop.f32.mrb[0].mxu0
  %v2738 = vadd.f32 0.0, %v2737
  %v2739 = vpop.f32.mrb[0].mxu0
  %2740 = vmatprep.mubr.f32.mxu0 0.0
  %2741 = vmatmul.mubr.f32.gmra.mrb[0].mxu0 %v2421
  %v2742 = vpop.f32.mrb[0].mxu0
  %v2743 = vadd.f32 0.0, %v2742
  %v2744 = vpop.f32.mrb[0].mxu0
  %2745 = vmatprep.mubr.f32.mxu0 0.0
  %2746 = vmatmul.mubr.f32.gmra.mrb[0].mxu0 %v2424
  %v2747 = vpop.f32.mrb[0].mxu0
  %v2748 = vadd.f32 0.0, %v2747
  %v2749 = vpop.f32.mrb[0].mxu0
  %2750 = vmatprep.mubr.f32.mxu0 0.0
  %2751 = vmatmul.mubr.f32.gmra.mrb[0].mxu0 %v2427
  %v2752 = vpop.f32.mrb[0].mxu0
  %v2753 = vadd.f32 0.0, %v2752
  %v2754 = vpop.f32.mrb[0].mxu0
  %2755 = vmatprep.mubr.f32.mxu0 0.0
  %2756 = vmatmul.mubr.f32.gmra.mrb[0].mxu0 %v2430
  %v2757 = vpop.f32.mrb[0].mxu0
  %v2758 = vadd.f32 0.0, %v2757
  %v2759 = vpop.f32.mrb[0].mxu0
  %2760 = vmatprep.mubr.f32.mxu0 0.0
  %2761 = vmatmul.mubr.f32.gmra.mrb[0].mxu0 %v2433
  %v2762 = vpop.f32.mrb[0].mxu0
  %v2763 = vadd.f32 0.0, %v2762
  %v2764 = vpop.f32.mrb[0].mxu0
  %2765 = vmatprep.mubr.f32.mxu0 0.0
  %2766 = vmatmul.mubr.f32.gmra.mrb[0].mxu0 %v2436
  %v2767 = vpop.f32.mrb[0].mxu0
  %v2768 = vadd.f32 0.0, %v2767
  %v2769 = vpop.f32.mrb[0].mxu0
  %2770 = vmatprep.mubr.f32.mxu0 0.0
  %2771 = vmatmul.mubr.f32.gmra.mrb[0].mxu0 %v2439
  %v2772 = vpop.f32.mrb[0].mxu0
  %v2773 = vadd.f32 0.0, %v2772
  %v2774 = vpop.f32.mrb[0].mxu0
  %2775 = vmatprep.mubr.f32.mxu0 0.0
  %2776 = vmatmul.mubr.f32.gmra.mrb[0].mxu0 %v2442
  %v2777 = vpop.f32.mrb[0].mxu0
  %v2778 = vadd.f32 0.0, %v2777
  %v2779 = vpop.f32.mrb[0].mxu0
  %2780 = vmatprep.mubr.f32.mxu0 0.0
  %2781 = vmatmul.mubr.f32.gmra.mrb[0].mxu0 %v2445
  %v2782 = vpop.f32.mrb[0].mxu0
  %v2783 = vadd.f32 0.0, %v2782
  %v2784 = vpop.f32.mrb[0].mxu0
  %2785 = vmatprep.mubr.f32.mxu0 0.0
  %2786 = vmatmul.mubr.f32.gmra.mrb[0].mxu0 %v2448
  %v2787 = vpop.f32.mrb[0].mxu0
  %v2788 = vadd.f32 0.0, %v2787
  %v2789 = vpop.f32.mrb[0].mxu0
  %2790 = vmatprep.mubr.f32.mxu0 0.0
  %2791 = vmatmul.mubr.f32.gmra.mrb[0].mxu0 %v2451
  %v2792 = vpop.f32.mrb[0].mxu0
  %v2793 = vadd.f32 0.0, %v2792
  %v2794 = vpop.f32.mrb[0].mxu0
  %2795 = vmatprep.mubr.f32.mxu0 0.0
  %2796 = vmatmul.mubr.f32.gmra.mrb[0].mxu0 %v2454
  %v2797 = vpop.f32.mrb[0].mxu0
  %v2798 = vadd.f32 0.0, %v2797
  %v2799 = vpop.f32.mrb[0].mxu0
  %2800 = vmatprep.mubr.f32.mxu0 0.0
  %2801 = vmatmul.mubr.f32.gmra.mrb[0].mxu0 %v2457
  %v2802 = vpop.f32.mrb[0].mxu0
  %v2803 = vadd.f32 0.0, %v2802
  %v2804 = vpop.f32.mrb[0].mxu0
  %2805 = vmatprep.mubr.f32.mxu0 0.0
  %2806 = vmatmul.mubr.f32.gmra.mrb[0].mxu0 %v2460
  %v2807 = vpop.f32.mrb[0].mxu0
  %v2808 = vadd.f32 0.0, %v2807
  %v2809 = vpop.f32.mrb[0].mxu0
  %2810 = vmatprep.mubr.f32.mxu0 0.0
  %2811 = vmatmul.mubr.f32.gmra.mrb[0].mxu0 %v2463
  %v2812 = vpop.f32.mrb[0].mxu0
  %v2813 = vadd.f32 0.0, %v2812
  %v2814 = vpop.f32.mrb[0].mxu0
  %2815 = vmatprep.mubr.f32.mxu0 0.0
  %2816 = vmatmul.mubr.f32.gmra.mrb[0].mxu0 %v2466
  %v2817 = vpop.f32.mrb[0].mxu0
  %v2818 = vadd.f32 0.0, %v2817
  %v2819 = vpop.f32.mrb[0].mxu0
  %2820 = vmatprep.mubr.f32.mxu0 0.0
  %2821 = vmatmul.mubr.f32.gmra.mrb[0].mxu0 %v2469
  %v2822 = vpop.f32.mrb[0].mxu0
  %v2823 = vadd.f32 0.0, %v2822
  %v2824 = vpop.f32.mrb[0].mxu0
  %2825 = vmatprep.mubr.f32.mxu0 0.0
  %2826 = vmatmul.mubr.f32.gmra.mrb[0].mxu0 %v2472
  %v2827 = vpop.f32.mrb[0].mxu0
  %v2828 = vadd.f32 0.0, %v2827
  %v2829 = vpop.f32.mrb[0].mxu0
  %2830 = vmatprep.mubr.f32.mxu0 0.0
  %2831 = vmatmul.mubr.f32.gmra.mrb[0].mxu0 %v2475
  %v2832 = vpop.f32.mrb[0].mxu0
  %v2833 = vadd.f32 0.0, %v2832
  %v2834 = vpop.f32.mrb[0].mxu0
  %2835 = vmatprep.mubr.f32.mxu0 0.0
  %2836 = vmatmul.mubr.f32.gmra.mrb[0].mxu0 %v2478
  %v2837 = vpop.f32.mrb[0].mxu0
  %v2838 = vadd.f32 0.0, %v2837
  %v2839 = vpop.f32.mrb[0].mxu0
  %2840 = vmatprep.mubr.f32.mxu0 0.0
  %2841 = vmatmul.mubr.f32.gmra.mrb[0].mxu0 %v2481
  %v2842 = vpop.f32.mrb[0].mxu0
  %v2843 = vadd.f32 0.0, %v2842
  %v2844 = vpop.f32.mrb[0].mxu0
  %2845 = vmatprep.mubr.f32.mxu0 0.0
  %2846 = vmatmul.mubr.f32.gmra.mrb[0].mxu0 %v2484
  %v2847 = vpop.f32.mrb[0].mxu0
  %v2848 = vadd.f32 0.0, %v2847
  %v2849 = vpop.f32.mrb[0].mxu0
  %2850 = vmatprep.mubr.f32.mxu0 0.0
  %2851 = vmatmul.mubr.f32.gmra.mrb[0].mxu0 %v2487
  %v2852 = vpop.f32.mrb[0].mxu0
  %v2853 = vadd.f32 0.0, %v2852
  %v2854 = vpop.f32.mrb[0].mxu0
  %2855 = vmatprep.mubr.f32.mxu0 0.0
  %2856 = vmatmul.mubr.f32.gmra.mrb[0].mxu0 %v2490
  %v2857 = vpop.f32.mrb[0].mxu0
  %v2858 = vadd.f32 0.0, %v2857
  %v2859 = vpop.f32.mrb[0].mxu0
  %2860 = vmatprep.mubr.f32.mxu0 0.0
  %2861 = vmatmul.mubr.f32.gmra.mrb[0].mxu0 %v2493
  %v2862 = vpop.f32.mrb[0].mxu0
  %v2863 = vadd.f32 0.0, %v2862
  %v2864 = vpop.f32.mrb[0].mxu0
  %2865 = vmatprep.mubr.f32.mxu0 0.0
  %2866 = vmatmul.mubr.f32.gmra.mrb[0].mxu0 %v2496
  %v2867 = vpop.f32.mrb[0].mxu0
  %v2868 = vadd.f32 0.0, %v2867
  %v2869 = vpop.f32.mrb[0].mxu0
  %2870 = vmatprep.mubr.f32.mxu0 0.0
  %2871 = vmatmul.mubr.f32.gmra.mrb[0].mxu0 %v2499
  %v2872 = vpop.f32.mrb[0].mxu0
  %v2873 = vadd.f32 0.0, %v2872
  %v2874 = vpop.f32.mrb[0].mxu0
  %2875 = vmatprep.mubr.f32.mxu0 0.0
  %2876 = vmatmul.mubr.f32.gmra.mrb[0].mxu0 %v2502
  %v2877 = vpop.f32.mrb[0].mxu0
  %v2878 = vadd.f32 0.0, %v2877
  %v2879 = vpop.f32.mrb[0].mxu0
  %2880 = vmatprep.mubr.f32.mxu0 0.0
  %2881 = vmatmul.mubr.f32.gmra.mrb[0].mxu0 %v2505
  %v2882 = vpop.f32.mrb[0].mxu0
  %v2883 = vadd.f32 0.0, %v2882
  %v2884 = vpop.f32.mrb[0].mxu0
  %2885 = vmatprep.mubr.f32.mxu0 0.0
  %2886 = vmatmul.mubr.f32.gmra.mrb[0].mxu0 %v2508
  %v2887 = vpop.f32.mrb[0].mxu0
  %v2888 = vadd.f32 0.0, %v2887
  %v2889 = vpop.f32.mrb[0].mxu0
  %2890 = vmatprep.mubr.f32.mxu0 0.0
  %2891 = vmatmul.mubr.f32.gmra.mrb[0].mxu0 %v2511
  %v2892 = vpop.f32.mrb[0].mxu0
  %v2893 = vadd.f32 0.0, %v2892
  %v2894 = vpop.f32.mrb[0].mxu0
  %2895 = vmatprep.mubr.f32.mxu0 0.0
  %2896 = vmatmul.mubr.f32.gmra.mrb[0].mxu0 %v2514
  %v2897 = vpop.f32.mrb[0].mxu0
  %v2898 = vadd.f32 0.0, %v2897
  %v2899 = vpop.f32.mrb[0].mxu0
  %2900 = vdwg.mxu0
  %v2901 = vadd.f32 %v2195, %v2583
  %v2902 = vadd.f32 %v2196, %v2588
  %v2903 = vadd.f32 %v2197, %v2593
  %v2904 = vadd.f32 %v2198, %v2598
  %v2905 = vadd.f32 %v2199, %v2603
  %v2906 = vadd.f32 %v2200, %v2608
  %v2907 = vadd.f32 %v2201, %v2613
  %v2908 = vadd.f32 %v2202, %v2618
  %v2909 = vadd.f32 %v2203, %v2623
  %v2910 = vadd.f32 %v2204, %v2628
  %v2911 = vadd.f32 %v2205, %v2633
  %v2912 = vadd.f32 %v2206, %v2638
  %v2913 = vadd.f32 %v2207, %v2643
  %v2914 = vadd.f32 %v2208, %v2648
  %v2915 = vadd.f32 %v2209, %v2653
  %v2916 = vadd.f32 %v2210, %v2658
  %v2917 = vadd.f32 %v2211, %v2663
  %v2918 = vadd.f32 %v2212, %v2668
  %v2919 = vadd.f32 %v2213, %v2673
  %v2920 = vadd.f32 %v2214, %v2678
  %v2921 = vadd.f32 %v2215, %v2683
  %v2922 = vadd.f32 %v2216, %v2688
  %v2923 = vadd.f32 %v2217, %v2693
  %v2924 = vadd.f32 %v2218, %v2698
  %v2925 = vadd.f32 %v2219, %v2703
  %v2926 = vadd.f32 %v2220, %v2708
  %v2927 = vadd.f32 %v2221, %v2713
  %v2928 = vadd.f32 %v2222, %v2718
  %v2929 = vadd.f32 %v2223, %v2723
  %v2930 = vadd.f32 %v2224, %v2728
  %v2931 = vadd.f32 %v2225, %v2733
  %v2932 = vadd.f32 %v2226, %v2738
  %v2933 = vadd.f32 %v2227, %v2743
  %v2934 = vadd.f32 %v2228, %v2748
  %v2935 = vadd.f32 %v2229, %v2753
  %v2936 = vadd.f32 %v2230, %v2758
  %v2937 = vadd.f32 %v2231, %v2763
  %v2938 = vadd.f32 %v2232, %v2768
  %v2939 = vadd.f32 %v2233, %v2773
  %v2940 = vadd.f32 %v2234, %v2778
  %v2941 = vadd.f32 %v2235, %v2783
  %v2942 = vadd.f32 %v2236, %v2788
  %v2943 = vadd.f32 %v2237, %v2793
  %v2944 = vadd.f32 %v2238, %v2798
  %v2945 = vadd.f32 %v2239, %v2803
  %v2946 = vadd.f32 %v2240, %v2808
  %v2947 = vadd.f32 %v2241, %v2813
  %v2948 = vadd.f32 %v2242, %v2818
  %v2949 = vadd.f32 %v2243, %v2823
  %v2950 = vadd.f32 %v2244, %v2828
  %v2951 = vadd.f32 %v2245, %v2833
  %v2952 = vadd.f32 %v2246, %v2838
  %v2953 = vadd.f32 %v2247, %v2843
  %v2954 = vadd.f32 %v2248, %v2848
  %v2955 = vadd.f32 %v2249, %v2853
  %v2956 = vadd.f32 %v2250, %v2858
  %v2957 = vadd.f32 %v2251, %v2863
  %v2958 = vadd.f32 %v2252, %v2868
  %v2959 = vadd.f32 %v2253, %v2873
  %v2960 = vadd.f32 %v2254, %v2878
  %v2961 = vadd.f32 %v2255, %v2883
  %v2962 = vadd.f32 %v2256, %v2888
  %v2963 = vadd.f32 %v2257, %v2893
  %v2964 = vadd.f32 %v2258, %v2898
  %v2965 = vld [vmem:[%s202 + $0x1] sm:$0xff]
  %v2966 = vld [vmem:[%s202 + $0x9] sm:$0xff]
  %v2967 = vld [vmem:[%s202 + $0x19] sm:$0xff]
  %v2968 = vld [vmem:[%s202 + $0x21] sm:$0xff]
  %v2969 = vld [vmem:[%s202 + $0x31] sm:$0xff]
  %v2970 = vld [vmem:[%s202 + $0x39] sm:$0xff]
  %v2971 = vld [vmem:[%s202 + $0x49] sm:$0xff]
  %v2972 = vld [vmem:[%s202 + $0x51] sm:$0xff]
  %v2973 = vld [vmem:[%s202 + $0x61] sm:$0xff]
  %v2974 = vld [vmem:[%s202 + $0x69] sm:$0xff]
  %v2975 = vld [vmem:[%s202 + $0x79] sm:$0xff]
  %v2976 = vld [vmem:[%s202 + $0x81] sm:$0xff]
  %v2977 = vld [vmem:[%s202 + $0x91] sm:$0xff]
  %v2978 = vld [vmem:[%s202 + $0x99] sm:$0xff]
  %v2979 = vld [vmem:[%s202 + $0xa9] sm:$0xff]
  %v2980 = vld [vmem:[%s202 + $0xb1] sm:$0xff]
  %v2981 = vld [vmem:[%s202 + $0xc1] sm:$0xff]
  %v2982 = vld [vmem:[%s202 + $0xc9] sm:$0xff]
  %v2983 = vld [vmem:[%s202 + $0xd9] sm:$0xff]
  %v2984 = vld [vmem:[%s202 + $0xe1] sm:$0xff]
  %v2985 = vld [vmem:[%s202 + $0xf1] sm:$0xff]
  %v2986 = vld [vmem:[%s202 + $0xf9] sm:$0xff]
  %v2987 = vld [vmem:[%s202 + $0x109] sm:$0xff]
  %v2988 = vld [vmem:[%s202 + $0x111] sm:$0xff]
  %v2989 = vld [vmem:[%s202 + $0x121] sm:$0xff]
  %v2990 = vld [vmem:[%s202 + $0x129] sm:$0xff]
  %v2991 = vld [vmem:[%s202 + $0x139] sm:$0xff]
  %v2992 = vld [vmem:[%s202 + $0x141] sm:$0xff]
  %v2993 = vld [vmem:[%s202 + $0x151] sm:$0xff]
  %v2994 = vld [vmem:[%s202 + $0x159] sm:$0xff]
  %v2995 = vld [vmem:[%s202 + $0x169] sm:$0xff]
  %v2996 = vld [vmem:[%s202 + $0x171] sm:$0xff]
  %v2997 = vld [vmem:[%s202 + $0x1b1] sm:$0xff]
  %v2998 = vld [vmem:[%s202 + $0x1b9] sm:$0xff]
  %v2999 = vld [vmem:[%s202 + $0x1c9] sm:$0xff]
  %v3000 = vld [vmem:[%s202 + $0x1d1] sm:$0xff]
  %v3001 = vld [vmem:[%s202 + $0x1e1] sm:$0xff]
  %v3002 = vld [vmem:[%s202 + $0x1e9] sm:$0xff]
  %v3003 = vld [vmem:[%s202 + $0x1f9] sm:$0xff]
  %v3004 = vld [vmem:[%s202 + $0x201] sm:$0xff]
  %v3005 = vld [vmem:[%s202 + $0x211] sm:$0xff]
  %v3006 = vld [vmem:[%s202 + $0x219] sm:$0xff]
  %v3007 = vld [vmem:[%s202 + $0x229] sm:$0xff]
  %v3008 = vld [vmem:[%s202 + $0x231] sm:$0xff]
  %v3009 = vld [vmem:[%s202 + $0x241] sm:$0xff]
  %v3010 = vld [vmem:[%s202 + $0x249] sm:$0xff]
  %v3011 = vld [vmem:[%s202 + $0x259] sm:$0xff]
  %v3012 = vld [vmem:[%s202 + $0x261] sm:$0xff]
  %v3013 = vld [vmem:[%s202 + $0x271] sm:$0xff]
  %v3014 = vld [vmem:[%s202 + $0x279] sm:$0xff]
  %v3015 = vld [vmem:[%s202 + $0x289] sm:$0xff]
  %v3016 = vld [vmem:[%s202 + $0x291] sm:$0xff]
  %v3017 = vld [vmem:[%s202 + $0x2a1] sm:$0xff]
  %v3018 = vld [vmem:[%s202 + $0x2a9] sm:$0xff]
  %v3019 = vld [vmem:[%s202 + $0x2b9] sm:$0xff]
  %v3020 = vld [vmem:[%s202 + $0x2c1] sm:$0xff]
  %v3021 = vld [vmem:[%s202 + $0x2d1] sm:$0xff]
  %v3022 = vld [vmem:[%s202 + $0x2d9] sm:$0xff]
  %v3023 = vld [vmem:[%s202 + $0x2e9] sm:$0xff]
  %v3024 = vld [vmem:[%s202 + $0x2f1] sm:$0xff]
  %v3025 = vld [vmem:[%s202 + $0x301] sm:$0xff]
  %v3026 = vld [vmem:[%s202 + $0x309] sm:$0xff]
  %v3027 = vld [vmem:[%s202 + $0x319] sm:$0xff]
  %v3028 = vld [vmem:[%s202 + $0x321] sm:$0xff]
  %v3029 = vld [vmem:[%s1 + $0x20] sm:$0xff]
  %v3031 = vsel %vm28, %v2965, 0
  %v3034 = vsel %vm28, %v2966, 0
  %v3037 = vsel %vm28, %v2967, 0
  %v3040 = vsel %vm28, %v2968, 0
  %v3043 = vsel %vm28, %v2969, 0
  %v3046 = vsel %vm28, %v2970, 0
  %v3049 = vsel %vm28, %v2971, 0
  %v3052 = vsel %vm28, %v2972, 0
  %v3055 = vsel %vm28, %v2973, 0
  %v3058 = vsel %vm28, %v2974, 0
  %v3061 = vsel %vm28, %v2975, 0
  %v3064 = vsel %vm28, %v2976, 0
  %v3067 = vsel %vm28, %v2977, 0
  %v3070 = vsel %vm28, %v2978, 0
  %v3073 = vsel %vm28, %v2979, 0
  %v3076 = vsel %vm28, %v2980, 0
  %v3079 = vsel %vm28, %v2981, 0
  %v3082 = vsel %vm28, %v2982, 0
  %v3085 = vsel %vm28, %v2983, 0
  %v3088 = vsel %vm28, %v2984, 0
  %v3091 = vsel %vm28, %v2985, 0
  %v3094 = vsel %vm28, %v2986, 0
  %v3097 = vsel %vm28, %v2987, 0
  %v3100 = vsel %vm28, %v2988, 0
  %v3103 = vsel %vm28, %v2989, 0
  %v3106 = vsel %vm28, %v2990, 0
  %v3109 = vsel %vm28, %v2991, 0
  %v3112 = vsel %vm28, %v2992, 0
  %v3115 = vsel %vm28, %v2993, 0
  %v3118 = vsel %vm28, %v2994, 0
  %v3121 = vsel %vm28, %v2995, 0
  %v3124 = vsel %vm28, %v2996, 0
  %v3127 = vsel %vm28, %v2997, 0
  %v3130 = vsel %vm28, %v2998, 0
  %v3133 = vsel %vm28, %v2999, 0
  %v3136 = vsel %vm28, %v3000, 0
  %v3139 = vsel %vm28, %v3001, 0
  %v3142 = vsel %vm28, %v3002, 0
  %v3145 = vsel %vm28, %v3003, 0
  %v3148 = vsel %vm28, %v3004, 0
  %v3151 = vsel %vm28, %v3005, 0
  %v3154 = vsel %vm28, %v3006, 0
  %v3157 = vsel %vm28, %v3007, 0
  %v3160 = vsel %vm28, %v3008, 0
  %v3163 = vsel %vm28, %v3009, 0
  %v3166 = vsel %vm28, %v3010, 0
  %v3169 = vsel %vm28, %v3011, 0
  %v3172 = vsel %vm28, %v3012, 0
  %v3175 = vsel %vm28, %v3013, 0
  %v3178 = vsel %vm28, %v3014, 0
  %v3181 = vsel %vm28, %v3015, 0
  %v3184 = vsel %vm28, %v3016, 0
  %v3187 = vsel %vm28, %v3017, 0
  %v3190 = vsel %vm28, %v3018, 0
  %v3193 = vsel %vm28, %v3019, 0
  %v3196 = vsel %vm28, %v3020, 0
  %v3199 = vsel %vm28, %v3021, 0
  %v3202 = vsel %vm28, %v3022, 0
  %v3205 = vsel %vm28, %v3023, 0
  %v3208 = vsel %vm28, %v3024, 0
  %v3211 = vsel %vm28, %v3025, 0
  %v3214 = vsel %vm28, %v3026, 0
  %v3217 = vsel %vm28, %v3027, 0
  %v3220 = vsel %vm28, %v3028, 0
  %3222 = vmatprep.subr.mxu0 0.0
  %3223 = vmatpush1.msra.mxu0 %v3029
  %3224 = vmatprep.subr.mxu0 0.0
  %3225 = vmatpush1.msra.mxu0 0.0
  %3226 = vmatprep.subr.mxu0 0.0
  %3227 = vmatpush1.msra.mxu0 0.0
  %3228 = vmatprep.subr.mxu0 0.0
  %3229 = vmatpush1.msra.mxu0 0.0
  %3230 = vmatprep.subr.mxu0 0.0
  %3231 = vmatpush1.msra.mxu0 0.0
  %3232 = vmatprep.subr.mxu0 0.0
  %3233 = vmatpush1.msra.mxu0 0.0
  %3234 = vmatprep.subr.mxu0 0.0
  %3235 = vmatpush1.msra.mxu0 0.0
  %3236 = vmatprep.subr.mxu0 0.0
  %3237 = vmatpush1.msra.mxu0 0.0
  %3238 = vmatprep.subr.mxu0 0.0
  %3239 = vmatpush1.msra.mxu0 0.0
  %3240 = vmatprep.subr.mxu0 0.0
  %3241 = vmatpush1.msra.mxu0 0.0
  %3242 = vmatprep.subr.mxu0 0.0
  %3243 = vmatpush1.msra.mxu0 0.0
  %3244 = vmatprep.subr.mxu0 0.0
  %3245 = vmatpush1.msra.mxu0 0.0
  %3246 = vmatprep.subr.mxu0 0.0
  %3247 = vmatpush1.msra.mxu0 0.0
  %3248 = vmatprep.subr.mxu0 0.0
  %3249 = vmatpush1.msra.mxu0 0.0
  %3250 = vmatprep.subr.mxu0 0.0
  %3251 = vmatpush1.msra.mxu0 0.0
  %3252 = vmatprep.subr.mxu0 0.0
  %3253 = vmatpush1.msra.mxu0 0.0
  %3254 = vmatprep.subr.mxu0 0.0
  %3255 = vmatpush1.msra.mxu0 0.0
  %3256 = vmatprep.subr.mxu0 0.0
  %3257 = vmatpush1.msra.mxu0 0.0
  %3258 = vmatprep.subr.mxu0 0.0
  %3259 = vmatpush1.msra.mxu0 0.0
  %3260 = vmatprep.subr.mxu0 0.0
  %3261 = vmatpush1.msra.mxu0 0.0
  %3262 = vmatprep.subr.mxu0 0.0
  %3263 = vmatpush1.msra.mxu0 0.0
  %3264 = vmatprep.subr.mxu0 0.0
  %3265 = vmatpush1.msra.mxu0 0.0
  %3266 = vmatprep.subr.mxu0 0.0
  %3267 = vmatpush1.msra.mxu0 0.0
  %3268 = vmatprep.subr.mxu0 0.0
  %3269 = vmatpush1.msra.mxu0 0.0
  %3270 = vmatprep.subr.mxu0 0.0
  %3271 = vmatpush1.msra.mxu0 0.0
  %3272 = vmatprep.subr.mxu0 0.0
  %3273 = vmatpush1.msra.mxu0 0.0
  %3274 = vmatprep.subr.mxu0 0.0
  %3275 = vmatpush1.msra.mxu0 0.0
  %3276 = vmatprep.subr.mxu0 0.0
  %3277 = vmatpush1.msra.mxu0 0.0
  %3278 = vmatprep.subr.mxu0 0.0
  %3279 = vmatpush1.msra.mxu0 0.0
  %3280 = vmatprep.subr.mxu0 0.0
  %3281 = vmatpush1.msra.mxu0 0.0
  %3282 = vmatprep.subr.mxu0 0.0
  %3283 = vmatpush1.msra.mxu0 0.0
  %3284 = vmatprep.subr.mxu0 0.0
  %3285 = vmatpush1.msra.mxu0 0.0
  %3286 = vmatprep.mubr.f32.mxu0 0.0
  %3287 = vmatmul.mubr.f32.gmra.mrb[0].mxu0 %v3031
  %v3288 = vpop.f32.mrb[0].mxu0
  %v3289 = vadd.f32 0.0, %v3288
  %v3290 = vpop.f32.mrb[0].mxu0
  %3291 = vmatprep.mubr.f32.mxu0 0.0
  %3292 = vmatmul.mubr.f32.gmra.mrb[0].mxu0 %v3034
  %v3293 = vpop.f32.mrb[0].mxu0
  %v3294 = vadd.f32 0.0, %v3293
  %v3295 = vpop.f32.mrb[0].mxu0
  %3296 = vmatprep.mubr.f32.mxu0 0.0
  %3297 = vmatmul.mubr.f32.gmra.mrb[0].mxu0 %v3037
  %v3298 = vpop.f32.mrb[0].mxu0
  %v3299 = vadd.f32 0.0, %v3298
  %v3300 = vpop.f32.mrb[0].mxu0
  %3301 = vmatprep.mubr.f32.mxu0 0.0
  %3302 = vmatmul.mubr.f32.gmra.mrb[0].mxu0 %v3040
  %v3303 = vpop.f32.mrb[0].mxu0
  %v3304 = vadd.f32 0.0, %v3303
  %v3305 = vpop.f32.mrb[0].mxu0
  %3306 = vmatprep.mubr.f32.mxu0 0.0
  %3307 = vmatmul.mubr.f32.gmra.mrb[0].mxu0 %v3043
  %v3308 = vpop.f32.mrb[0].mxu0
  %v3309 = vadd.f32 0.0, %v3308
  %v3310 = vpop.f32.mrb[0].mxu0
  %3311 = vmatprep.mubr.f32.mxu0 0.0
  %3312 = vmatmul.mubr.f32.gmra.mrb[0].mxu0 %v3046
  %v3313 = vpop.f32.mrb[0].mxu0
  %v3314 = vadd.f32 0.0, %v3313
  %v3315 = vpop.f32.mrb[0].mxu0
  %3316 = vmatprep.mubr.f32.mxu0 0.0
  %3317 = vmatmul.mubr.f32.gmra.mrb[0].mxu0 %v3049
  %v3318 = vpop.f32.mrb[0].mxu0
  %v3319 = vadd.f32 0.0, %v3318
  %v3320 = vpop.f32.mrb[0].mxu0
  %3321 = vmatprep.mubr.f32.mxu0 0.0
  %3322 = vmatmul.mubr.f32.gmra.mrb[0].mxu0 %v3052
  %v3323 = vpop.f32.mrb[0].mxu0
  %v3324 = vadd.f32 0.0, %v3323
  %v3325 = vpop.f32.mrb[0].mxu0
  %3326 = vmatprep.mubr.f32.mxu0 0.0
  %3327 = vmatmul.mubr.f32.gmra.mrb[0].mxu0 %v3055
  %v3328 = vpop.f32.mrb[0].mxu0
  %v3329 = vadd.f32 0.0, %v3328
  %v3330 = vpop.f32.mrb[0].mxu0
  %3331 = vmatprep.mubr.f32.mxu0 0.0
  %3332 = vmatmul.mubr.f32.gmra.mrb[0].mxu0 %v3058
  %v3333 = vpop.f32.mrb[0].mxu0
  %v3334 = vadd.f32 0.0, %v3333
  %v3335 = vpop.f32.mrb[0].mxu0
  %3336 = vmatprep.mubr.f32.mxu0 0.0
  %3337 = vmatmul.mubr.f32.gmra.mrb[0].mxu0 %v3061
  %v3338 = vpop.f32.mrb[0].mxu0
  %v3339 = vadd.f32 0.0, %v3338
  %v3340 = vpop.f32.mrb[0].mxu0
  %3341 = vmatprep.mubr.f32.mxu0 0.0
  %3342 = vmatmul.mubr.f32.gmra.mrb[0].mxu0 %v3064
  %v3343 = vpop.f32.mrb[0].mxu0
  %v3344 = vadd.f32 0.0, %v3343
  %v3345 = vpop.f32.mrb[0].mxu0
  %3346 = vmatprep.mubr.f32.mxu0 0.0
  %3347 = vmatmul.mubr.f32.gmra.mrb[0].mxu0 %v3067
  %v3348 = vpop.f32.mrb[0].mxu0
  %v3349 = vadd.f32 0.0, %v3348
  %v3350 = vpop.f32.mrb[0].mxu0
  %3351 = vmatprep.mubr.f32.mxu0 0.0
  %3352 = vmatmul.mubr.f32.gmra.mrb[0].mxu0 %v3070
  %v3353 = vpop.f32.mrb[0].mxu0
  %v3354 = vadd.f32 0.0, %v3353
  %v3355 = vpop.f32.mrb[0].mxu0
  %3356 = vmatprep.mubr.f32.mxu0 0.0
  %3357 = vmatmul.mubr.f32.gmra.mrb[0].mxu0 %v3073
  %v3358 = vpop.f32.mrb[0].mxu0
  %v3359 = vadd.f32 0.0, %v3358
  %v3360 = vpop.f32.mrb[0].mxu0
  %3361 = vmatprep.mubr.f32.mxu0 0.0
  %3362 = vmatmul.mubr.f32.gmra.mrb[0].mxu0 %v3076
  %v3363 = vpop.f32.mrb[0].mxu0
  %v3364 = vadd.f32 0.0, %v3363
  %v3365 = vpop.f32.mrb[0].mxu0
  %3366 = vmatprep.mubr.f32.mxu0 0.0
  %3367 = vmatmul.mubr.f32.gmra.mrb[0].mxu0 %v3079
  %v3368 = vpop.f32.mrb[0].mxu0
  %v3369 = vadd.f32 0.0, %v3368
  %v3370 = vpop.f32.mrb[0].mxu0
  %3371 = vmatprep.mubr.f32.mxu0 0.0
  %3372 = vmatmul.mubr.f32.gmra.mrb[0].mxu0 %v3082
  %v3373 = vpop.f32.mrb[0].mxu0
  %v3374 = vadd.f32 0.0, %v3373
  %v3375 = vpop.f32.mrb[0].mxu0
  %3376 = vmatprep.mubr.f32.mxu0 0.0
  %3377 = vmatmul.mubr.f32.gmra.mrb[0].mxu0 %v3085
  %v3378 = vpop.f32.mrb[0].mxu0
  %v3379 = vadd.f32 0.0, %v3378
  %v3380 = vpop.f32.mrb[0].mxu0
  %3381 = vmatprep.mubr.f32.mxu0 0.0
  %3382 = vmatmul.mubr.f32.gmra.mrb[0].mxu0 %v3088
  %v3383 = vpop.f32.mrb[0].mxu0
  %v3384 = vadd.f32 0.0, %v3383
  %v3385 = vpop.f32.mrb[0].mxu0
  %3386 = vmatprep.mubr.f32.mxu0 0.0
  %3387 = vmatmul.mubr.f32.gmra.mrb[0].mxu0 %v3091
  %v3388 = vpop.f32.mrb[0].mxu0
  %v3389 = vadd.f32 0.0, %v3388
  %v3390 = vpop.f32.mrb[0].mxu0
  %3391 = vmatprep.mubr.f32.mxu0 0.0
  %3392 = vmatmul.mubr.f32.gmra.mrb[0].mxu0 %v3094
  %v3393 = vpop.f32.mrb[0].mxu0
  %v3394 = vadd.f32 0.0, %v3393
  %v3395 = vpop.f32.mrb[0].mxu0
  %3396 = vmatprep.mubr.f32.mxu0 0.0
  %3397 = vmatmul.mubr.f32.gmra.mrb[0].mxu0 %v3097
  %v3398 = vpop.f32.mrb[0].mxu0
  %v3399 = vadd.f32 0.0, %v3398
  %v3400 = vpop.f32.mrb[0].mxu0
  %3401 = vmatprep.mubr.f32.mxu0 0.0
  %3402 = vmatmul.mubr.f32.gmra.mrb[0].mxu0 %v3100
  %v3403 = vpop.f32.mrb[0].mxu0
  %v3404 = vadd.f32 0.0, %v3403
  %v3405 = vpop.f32.mrb[0].mxu0
  %3406 = vmatprep.mubr.f32.mxu0 0.0
  %3407 = vmatmul.mubr.f32.gmra.mrb[0].mxu0 %v3103
  %v3408 = vpop.f32.mrb[0].mxu0
  %v3409 = vadd.f32 0.0, %v3408
  %v3410 = vpop.f32.mrb[0].mxu0
  %3411 = vmatprep.mubr.f32.mxu0 0.0
  %3412 = vmatmul.mubr.f32.gmra.mrb[0].mxu0 %v3106
  %v3413 = vpop.f32.mrb[0].mxu0
  %v3414 = vadd.f32 0.0, %v3413
  %v3415 = vpop.f32.mrb[0].mxu0
  %3416 = vmatprep.mubr.f32.mxu0 0.0
  %3417 = vmatmul.mubr.f32.gmra.mrb[0].mxu0 %v3109
  %v3418 = vpop.f32.mrb[0].mxu0
  %v3419 = vadd.f32 0.0, %v3418
  %v3420 = vpop.f32.mrb[0].mxu0
  %3421 = vmatprep.mubr.f32.mxu0 0.0
  %3422 = vmatmul.mubr.f32.gmra.mrb[0].mxu0 %v3112
  %v3423 = vpop.f32.mrb[0].mxu0
  %v3424 = vadd.f32 0.0, %v3423
  %v3425 = vpop.f32.mrb[0].mxu0
  %3426 = vmatprep.mubr.f32.mxu0 0.0
  %3427 = vmatmul.mubr.f32.gmra.mrb[0].mxu0 %v3115
  %v3428 = vpop.f32.mrb[0].mxu0
  %v3429 = vadd.f32 0.0, %v3428
  %v3430 = vpop.f32.mrb[0].mxu0
  %3431 = vmatprep.mubr.f32.mxu0 0.0
  %3432 = vmatmul.mubr.f32.gmra.mrb[0].mxu0 %v3118
  %v3433 = vpop.f32.mrb[0].mxu0
  %v3434 = vadd.f32 0.0, %v3433
  %v3435 = vpop.f32.mrb[0].mxu0
  %3436 = vmatprep.mubr.f32.mxu0 0.0
  %3437 = vmatmul.mubr.f32.gmra.mrb[0].mxu0 %v3121
  %v3438 = vpop.f32.mrb[0].mxu0
  %v3439 = vadd.f32 0.0, %v3438
  %v3440 = vpop.f32.mrb[0].mxu0
  %3441 = vmatprep.mubr.f32.mxu0 0.0
  %3442 = vmatmul.mubr.f32.gmra.mrb[0].mxu0 %v3124
  %v3443 = vpop.f32.mrb[0].mxu0
  %v3444 = vadd.f32 0.0, %v3443
  %v3445 = vpop.f32.mrb[0].mxu0
  %3446 = vmatprep.mubr.f32.mxu0 0.0
  %3447 = vmatmul.mubr.f32.gmra.mrb[0].mxu0 %v3127
  %v3448 = vpop.f32.mrb[0].mxu0
  %v3449 = vadd.f32 0.0, %v3448
  %v3450 = vpop.f32.mrb[0].mxu0
  %3451 = vmatprep.mubr.f32.mxu0 0.0
  %3452 = vmatmul.mubr.f32.gmra.mrb[0].mxu0 %v3130
  %v3453 = vpop.f32.mrb[0].mxu0
  %v3454 = vadd.f32 0.0, %v3453
  %v3455 = vpop.f32.mrb[0].mxu0
  %3456 = vmatprep.mubr.f32.mxu0 0.0
  %3457 = vmatmul.mubr.f32.gmra.mrb[0].mxu0 %v3133
  %v3458 = vpop.f32.mrb[0].mxu0
  %v3459 = vadd.f32 0.0, %v3458
  %v3460 = vpop.f32.mrb[0].mxu0
  %3461 = vmatprep.mubr.f32.mxu0 0.0
  %3462 = vmatmul.mubr.f32.gmra.mrb[0].mxu0 %v3136
  %v3463 = vpop.f32.mrb[0].mxu0
  %v3464 = vadd.f32 0.0, %v3463
  %v3465 = vpop.f32.mrb[0].mxu0
  %3466 = vmatprep.mubr.f32.mxu0 0.0
  %3467 = vmatmul.mubr.f32.gmra.mrb[0].mxu0 %v3139
  %v3468 = vpop.f32.mrb[0].mxu0
  %v3469 = vadd.f32 0.0, %v3468
  %v3470 = vpop.f32.mrb[0].mxu0
  %3471 = vmatprep.mubr.f32.mxu0 0.0
  %3472 = vmatmul.mubr.f32.gmra.mrb[0].mxu0 %v3142
  %v3473 = vpop.f32.mrb[0].mxu0
  %v3474 = vadd.f32 0.0, %v3473
  %v3475 = vpop.f32.mrb[0].mxu0
  %3476 = vmatprep.mubr.f32.mxu0 0.0
  %3477 = vmatmul.mubr.f32.gmra.mrb[0].mxu0 %v3145
  %v3478 = vpop.f32.mrb[0].mxu0
  %v3479 = vadd.f32 0.0, %v3478
  %v3480 = vpop.f32.mrb[0].mxu0
  %3481 = vmatprep.mubr.f32.mxu0 0.0
  %3482 = vmatmul.mubr.f32.gmra.mrb[0].mxu0 %v3148
  %v3483 = vpop.f32.mrb[0].mxu0
  %v3484 = vadd.f32 0.0, %v3483
  %v3485 = vpop.f32.mrb[0].mxu0
  %3486 = vmatprep.mubr.f32.mxu0 0.0
  %3487 = vmatmul.mubr.f32.gmra.mrb[0].mxu0 %v3151
  %v3488 = vpop.f32.mrb[0].mxu0
  %v3489 = vadd.f32 0.0, %v3488
  %v3490 = vpop.f32.mrb[0].mxu0
  %3491 = vmatprep.mubr.f32.mxu0 0.0
  %3492 = vmatmul.mubr.f32.gmra.mrb[0].mxu0 %v3154
  %v3493 = vpop.f32.mrb[0].mxu0
  %v3494 = vadd.f32 0.0, %v3493
  %v3495 = vpop.f32.mrb[0].mxu0
  %3496 = vmatprep.mubr.f32.mxu0 0.0
  %3497 = vmatmul.mubr.f32.gmra.mrb[0].mxu0 %v3157
  %v3498 = vpop.f32.mrb[0].mxu0
  %v3499 = vadd.f32 0.0, %v3498
  %v3500 = vpop.f32.mrb[0].mxu0
  %3501 = vmatprep.mubr.f32.mxu0 0.0
  %3502 = vmatmul.mubr.f32.gmra.mrb[0].mxu0 %v3160
  %v3503 = vpop.f32.mrb[0].mxu0
  %v3504 = vadd.f32 0.0, %v3503
  %v3505 = vpop.f32.mrb[0].mxu0
  %3506 = vmatprep.mubr.f32.mxu0 0.0
  %3507 = vmatmul.mubr.f32.gmra.mrb[0].mxu0 %v3163
  %v3508 = vpop.f32.mrb[0].mxu0
  %v3509 = vadd.f32 0.0, %v3508
  %v3510 = vpop.f32.mrb[0].mxu0
  %3511 = vmatprep.mubr.f32.mxu0 0.0
  %3512 = vmatmul.mubr.f32.gmra.mrb[0].mxu0 %v3166
  %v3513 = vpop.f32.mrb[0].mxu0
  %v3514 = vadd.f32 0.0, %v3513
  %v3515 = vpop.f32.mrb[0].mxu0
  %3516 = vmatprep.mubr.f32.mxu0 0.0
  %3517 = vmatmul.mubr.f32.gmra.mrb[0].mxu0 %v3169
  %v3518 = vpop.f32.mrb[0].mxu0
  %v3519 = vadd.f32 0.0, %v3518
  %v3520 = vpop.f32.mrb[0].mxu0
  %3521 = vmatprep.mubr.f32.mxu0 0.0
  %3522 = vmatmul.mubr.f32.gmra.mrb[0].mxu0 %v3172
  %v3523 = vpop.f32.mrb[0].mxu0
  %v3524 = vadd.f32 0.0, %v3523
  %v3525 = vpop.f32.mrb[0].mxu0
  %3526 = vmatprep.mubr.f32.mxu0 0.0
  %3527 = vmatmul.mubr.f32.gmra.mrb[0].mxu0 %v3175
  %v3528 = vpop.f32.mrb[0].mxu0
  %v3529 = vadd.f32 0.0, %v3528
  %v3530 = vpop.f32.mrb[0].mxu0
  %3531 = vmatprep.mubr.f32.mxu0 0.0
  %3532 = vmatmul.mubr.f32.gmra.mrb[0].mxu0 %v3178
  %v3533 = vpop.f32.mrb[0].mxu0
  %v3534 = vadd.f32 0.0, %v3533
  %v3535 = vpop.f32.mrb[0].mxu0
  %3536 = vmatprep.mubr.f32.mxu0 0.0
  %3537 = vmatmul.mubr.f32.gmra.mrb[0].mxu0 %v3181
  %v3538 = vpop.f32.mrb[0].mxu0
  %v3539 = vadd.f32 0.0, %v3538
  %v3540 = vpop.f32.mrb[0].mxu0
  %3541 = vmatprep.mubr.f32.mxu0 0.0
  %3542 = vmatmul.mubr.f32.gmra.mrb[0].mxu0 %v3184
  %v3543 = vpop.f32.mrb[0].mxu0
  %v3544 = vadd.f32 0.0, %v3543
  %v3545 = vpop.f32.mrb[0].mxu0
  %3546 = vmatprep.mubr.f32.mxu0 0.0
  %3547 = vmatmul.mubr.f32.gmra.mrb[0].mxu0 %v3187
  %v3548 = vpop.f32.mrb[0].mxu0
  %v3549 = vadd.f32 0.0, %v3548
  %v3550 = vpop.f32.mrb[0].mxu0
  %3551 = vmatprep.mubr.f32.mxu0 0.0
  %3552 = vmatmul.mubr.f32.gmra.mrb[0].mxu0 %v3190
  %v3553 = vpop.f32.mrb[0].mxu0
  %v3554 = vadd.f32 0.0, %v3553
  %v3555 = vpop.f32.mrb[0].mxu0
  %3556 = vmatprep.mubr.f32.mxu0 0.0
  %3557 = vmatmul.mubr.f32.gmra.mrb[0].mxu0 %v3193
  %v3558 = vpop.f32.mrb[0].mxu0
  %v3559 = vadd.f32 0.0, %v3558
  %v3560 = vpop.f32.mrb[0].mxu0
  %3561 = vmatprep.mubr.f32.mxu0 0.0
  %3562 = vmatmul.mubr.f32.gmra.mrb[0].mxu0 %v3196
  %v3563 = vpop.f32.mrb[0].mxu0
  %v3564 = vadd.f32 0.0, %v3563
  %v3565 = vpop.f32.mrb[0].mxu0
  %3566 = vmatprep.mubr.f32.mxu0 0.0
  %3567 = vmatmul.mubr.f32.gmra.mrb[0].mxu0 %v3199
  %v3568 = vpop.f32.mrb[0].mxu0
  %v3569 = vadd.f32 0.0, %v3568
  %v3570 = vpop.f32.mrb[0].mxu0
  %3571 = vmatprep.mubr.f32.mxu0 0.0
  %3572 = vmatmul.mubr.f32.gmra.mrb[0].mxu0 %v3202
  %v3573 = vpop.f32.mrb[0].mxu0
  %v3574 = vadd.f32 0.0, %v3573
  %v3575 = vpop.f32.mrb[0].mxu0
  %3576 = vmatprep.mubr.f32.mxu0 0.0
  %3577 = vmatmul.mubr.f32.gmra.mrb[0].mxu0 %v3205
  %v3578 = vpop.f32.mrb[0].mxu0
  %v3579 = vadd.f32 0.0, %v3578
  %v3580 = vpop.f32.mrb[0].mxu0
  %3581 = vmatprep.mubr.f32.mxu0 0.0
  %3582 = vmatmul.mubr.f32.gmra.mrb[0].mxu0 %v3208
  %v3583 = vpop.f32.mrb[0].mxu0
  %v3584 = vadd.f32 0.0, %v3583
  %v3585 = vpop.f32.mrb[0].mxu0
  %3586 = vmatprep.mubr.f32.mxu0 0.0
  %3587 = vmatmul.mubr.f32.gmra.mrb[0].mxu0 %v3211
  %v3588 = vpop.f32.mrb[0].mxu0
  %v3589 = vadd.f32 0.0, %v3588
  %v3590 = vpop.f32.mrb[0].mxu0
  %3591 = vmatprep.mubr.f32.mxu0 0.0
  %3592 = vmatmul.mubr.f32.gmra.mrb[0].mxu0 %v3214
  %v3593 = vpop.f32.mrb[0].mxu0
  %v3594 = vadd.f32 0.0, %v3593
  %v3595 = vpop.f32.mrb[0].mxu0
  %3596 = vmatprep.mubr.f32.mxu0 0.0
  %3597 = vmatmul.mubr.f32.gmra.mrb[0].mxu0 %v3217
  %v3598 = vpop.f32.mrb[0].mxu0
  %v3599 = vadd.f32 0.0, %v3598
  %v3600 = vpop.f32.mrb[0].mxu0
  %3601 = vmatprep.mubr.f32.mxu0 0.0
  %3602 = vmatmul.mubr.f32.gmra.mrb[0].mxu0 %v3220
  %v3603 = vpop.f32.mrb[0].mxu0
  %v3604 = vadd.f32 0.0, %v3603
  %v3605 = vpop.f32.mrb[0].mxu0
  %3606 = vdwg.mxu0
  %v3607 = vadd.f32 %v2901, %v3289
  %v3608 = vadd.f32 %v2902, %v3294
  %v3609 = vadd.f32 %v2903, %v3299
  %v3610 = vadd.f32 %v2904, %v3304
  %v3611 = vadd.f32 %v2905, %v3309
  %v3612 = vadd.f32 %v2906, %v3314
  %v3613 = vadd.f32 %v2907, %v3319
  %v3614 = vadd.f32 %v2908, %v3324
  %v3615 = vadd.f32 %v2909, %v3329
  %v3616 = vadd.f32 %v2910, %v3334
  %v3617 = vadd.f32 %v2911, %v3339
  %v3618 = vadd.f32 %v2912, %v3344
  %v3619 = vadd.f32 %v2913, %v3349
  %v3620 = vadd.f32 %v2914, %v3354
  %v3621 = vadd.f32 %v2915, %v3359
  %v3622 = vadd.f32 %v2916, %v3364
  %v3623 = vadd.f32 %v2917, %v3369
  %v3624 = vadd.f32 %v2918, %v3374
  %v3625 = vadd.f32 %v2919, %v3379
  %v3626 = vadd.f32 %v2920, %v3384
  %v3627 = vadd.f32 %v2921, %v3389
  %v3628 = vadd.f32 %v2922, %v3394
  %v3629 = vadd.f32 %v2923, %v3399
  %v3630 = vadd.f32 %v2924, %v3404
  %v3631 = vadd.f32 %v2925, %v3409
  %v3632 = vadd.f32 %v2926, %v3414
  %v3633 = vadd.f32 %v2927, %v3419
  %v3634 = vadd.f32 %v2928, %v3424
  %v3635 = vadd.f32 %v2929, %v3429
  %v3636 = vadd.f32 %v2930, %v3434
  %v3637 = vadd.f32 %v2931, %v3439
  %v3638 = vadd.f32 %v2932, %v3444
  %v3639 = vadd.f32 %v2933, %v3449
  %v3640 = vadd.f32 %v2934, %v3454
  %v3641 = vadd.f32 %v2935, %v3459
  %v3642 = vadd.f32 %v2936, %v3464
  %v3643 = vadd.f32 %v2937, %v3469
  %v3644 = vadd.f32 %v2938, %v3474
  %v3645 = vadd.f32 %v2939, %v3479
  %v3646 = vadd.f32 %v2940, %v3484
  %v3647 = vadd.f32 %v2941, %v3489
  %v3648 = vadd.f32 %v2942, %v3494
  %v3649 = vadd.f32 %v2943, %v3499
  %v3650 = vadd.f32 %v2944, %v3504
  %v3651 = vadd.f32 %v2945, %v3509
  %v3652 = vadd.f32 %v2946, %v3514
  %v3653 = vadd.f32 %v2947, %v3519
  %v3654 = vadd.f32 %v2948, %v3524
  %v3655 = vadd.f32 %v2949, %v3529
  %v3656 = vadd.f32 %v2950, %v3534
  %v3657 = vadd.f32 %v2951, %v3539
  %v3658 = vadd.f32 %v2952, %v3544
  %v3659 = vadd.f32 %v2953, %v3549
  %v3660 = vadd.f32 %v2954, %v3554
  %v3661 = vadd.f32 %v2955, %v3559
  %v3662 = vadd.f32 %v2956, %v3564
  %v3663 = vadd.f32 %v2957, %v3569
  %v3664 = vadd.f32 %v2958, %v3574
  %v3665 = vadd.f32 %v2959, %v3579
  %v3666 = vadd.f32 %v2960, %v3584
  %v3667 = vadd.f32 %v2961, %v3589
  %v3668 = vadd.f32 %v2962, %v3594
  %v3669 = vadd.f32 %v2963, %v3599
  %v3670 = vadd.f32 %v2964, %v3604
  %v3671 = vld [vmem:[%s202 + $0x2] sm:$0xff]
  %v3672 = vld [vmem:[%s202 + $0xa] sm:$0xff]
  %v3673 = vld [vmem:[%s202 + $0x1a] sm:$0xff]
  %v3674 = vld [vmem:[%s202 + $0x22] sm:$0xff]
  %v3675 = vld [vmem:[%s202 + $0x32] sm:$0xff]
  %v3676 = vld [vmem:[%s202 + $0x3a] sm:$0xff]
  %v3677 = vld [vmem:[%s202 + $0x4a] sm:$0xff]
  %v3678 = vld [vmem:[%s202 + $0x52] sm:$0xff]
  %v3679 = vld [vmem:[%s202 + $0x62] sm:$0xff]
  %v3680 = vld [vmem:[%s202 + $0x6a] sm:$0xff]
  %v3681 = vld [vmem:[%s202 + $0x7a] sm:$0xff]
  %v3682 = vld [vmem:[%s202 + $0x82] sm:$0xff]
  %v3683 = vld [vmem:[%s202 + $0x92] sm:$0xff]
  %v3684 = vld [vmem:[%s202 + $0x9a] sm:$0xff]
  %v3685 = vld [vmem:[%s202 + $0xaa] sm:$0xff]
  %v3686 = vld [vmem:[%s202 + $0xb2] sm:$0xff]
  %v3687 = vld [vmem:[%s202 + $0xc2] sm:$0xff]
  %v3688 = vld [vmem:[%s202 + $0xca] sm:$0xff]
  %v3689 = vld [vmem:[%s202 + $0xda] sm:$0xff]
  %v3690 = vld [vmem:[%s202 + $0xe2] sm:$0xff]
  %v3691 = vld [vmem:[%s202 + $0xf2] sm:$0xff]
  %v3692 = vld [vmem:[%s202 + $0xfa] sm:$0xff]
  %v3693 = vld [vmem:[%s202 + $0x10a] sm:$0xff]
  %v3694 = vld [vmem:[%s202 + $0x112] sm:$0xff]
  %v3695 = vld [vmem:[%s202 + $0x122] sm:$0xff]
  %v3696 = vld [vmem:[%s202 + $0x12a] sm:$0xff]
  %v3697 = vld [vmem:[%s202 + $0x13a] sm:$0xff]
  %v3698 = vld [vmem:[%s202 + $0x142] sm:$0xff]
  %v3699 = vld [vmem:[%s202 + $0x152] sm:$0xff]
  %v3700 = vld [vmem:[%s202 + $0x15a] sm:$0xff]
  %v3701 = vld [vmem:[%s202 + $0x16a] sm:$0xff]
  %v3702 = vld [vmem:[%s202 + $0x172] sm:$0xff]
  %v3703 = vld [vmem:[%s202 + $0x1b2] sm:$0xff]
  %v3704 = vld [vmem:[%s202 + $0x1ba] sm:$0xff]
  %v3705 = vld [vmem:[%s202 + $0x1ca] sm:$0xff]
  %v3706 = vld [vmem:[%s202 + $0x1d2] sm:$0xff]
  %v3707 = vld [vmem:[%s202 + $0x1e2] sm:$0xff]
  %v3708 = vld [vmem:[%s202 + $0x1ea] sm:$0xff]
  %v3709 = vld [vmem:[%s202 + $0x1fa] sm:$0xff]
  %v3710 = vld [vmem:[%s202 + $0x202] sm:$0xff]
  %v3711 = vld [vmem:[%s202 + $0x212] sm:$0xff]
  %v3712 = vld [vmem:[%s202 + $0x21a] sm:$0xff]
  %v3713 = vld [vmem:[%s202 + $0x22a] sm:$0xff]
  %v3714 = vld [vmem:[%s202 + $0x232] sm:$0xff]
  %v3715 = vld [vmem:[%s202 + $0x242] sm:$0xff]
  %v3716 = vld [vmem:[%s202 + $0x24a] sm:$0xff]
  %v3717 = vld [vmem:[%s202 + $0x25a] sm:$0xff]
  %v3718 = vld [vmem:[%s202 + $0x262] sm:$0xff]
  %v3719 = vld [vmem:[%s202 + $0x272] sm:$0xff]
  %v3720 = vld [vmem:[%s202 + $0x27a] sm:$0xff]
  %v3721 = vld [vmem:[%s202 + $0x28a] sm:$0xff]
  %v3722 = vld [vmem:[%s202 + $0x292] sm:$0xff]
  %v3723 = vld [vmem:[%s202 + $0x2a2] sm:$0xff]
  %v3724 = vld [vmem:[%s202 + $0x2aa] sm:$0xff]
  %v3725 = vld [vmem:[%s202 + $0x2ba] sm:$0xff]
  %v3726 = vld [vmem:[%s202 + $0x2c2] sm:$0xff]
  %v3727 = vld [vmem:[%s202 + $0x2d2] sm:$0xff]
  %v3728 = vld [vmem:[%s202 + $0x2da] sm:$0xff]
  %v3729 = vld [vmem:[%s202 + $0x2ea] sm:$0xff]
  %v3730 = vld [vmem:[%s202 + $0x2f2] sm:$0xff]
  %v3731 = vld [vmem:[%s202 + $0x302] sm:$0xff]
  %v3732 = vld [vmem:[%s202 + $0x30a] sm:$0xff]
  %v3733 = vld [vmem:[%s202 + $0x31a] sm:$0xff]
  %v3734 = vld [vmem:[%s202 + $0x322] sm:$0xff]
  %v3735 = vld [vmem:[%s1 + $0x28] sm:$0xff]
  %v3737 = vsel %vm28, %v3671, 0
  %v3740 = vsel %vm28, %v3672, 0
  %v3743 = vsel %vm28, %v3673, 0
  %v3746 = vsel %vm28, %v3674, 0
  %v3749 = vsel %vm28, %v3675, 0
  %v3752 = vsel %vm28, %v3676, 0
  %v3755 = vsel %vm28, %v3677, 0
  %v3758 = vsel %vm28, %v3678, 0
  %v3761 = vsel %vm28, %v3679, 0
  %v3764 = vsel %vm28, %v3680, 0
  %v3767 = vsel %vm28, %v3681, 0
  %v3770 = vsel %vm28, %v3682, 0
  %v3773 = vsel %vm28, %v3683, 0
  %v3776 = vsel %vm28, %v3684, 0
  %v3779 = vsel %vm28, %v3685, 0
  %v3782 = vsel %vm28, %v3686, 0
  %v3785 = vsel %vm28, %v3687, 0
  %v3788 = vsel %vm28, %v3688, 0
  %v3791 = vsel %vm28, %v3689, 0
  %v3794 = vsel %vm28, %v3690, 0
  %v3797 = vsel %vm28, %v3691, 0
  %v3800 = vsel %vm28, %v3692, 0
  %v3803 = vsel %vm28, %v3693, 0
  %v3806 = vsel %vm28, %v3694, 0
  %v3809 = vsel %vm28, %v3695, 0
  %v3812 = vsel %vm28, %v3696, 0
  %v3815 = vsel %vm28, %v3697, 0
  %v3818 = vsel %vm28, %v3698, 0
  %v3821 = vsel %vm28, %v3699, 0
  %v3824 = vsel %vm28, %v3700, 0
  %v3827 = vsel %vm28, %v3701, 0
  %v3830 = vsel %vm28, %v3702, 0
  %v3833 = vsel %vm28, %v3703, 0
  %v3836 = vsel %vm28, %v3704, 0
  %v3839 = vsel %vm28, %v3705, 0
  %v3842 = vsel %vm28, %v3706, 0
  %v3845 = vsel %vm28, %v3707, 0
  %v3848 = vsel %vm28, %v3708, 0
  %v3851 = vsel %vm28, %v3709, 0
  %v3854 = vsel %vm28, %v3710, 0
  %v3857 = vsel %vm28, %v3711, 0
  %v3860 = vsel %vm28, %v3712, 0
  %v3863 = vsel %vm28, %v3713, 0
  %v3866 = vsel %vm28, %v3714, 0
  %v3869 = vsel %vm28, %v3715, 0
  %v3872 = vsel %vm28, %v3716, 0
  %v3875 = vsel %vm28, %v3717, 0
  %v3878 = vsel %vm28, %v3718, 0
  %v3881 = vsel %vm28, %v3719, 0
  %v3884 = vsel %vm28, %v3720, 0
  %v3887 = vsel %vm28, %v3721, 0
  %v3890 = vsel %vm28, %v3722, 0
  %v3893 = vsel %vm28, %v3723, 0
  %v3896 = vsel %vm28, %v3724, 0
  %v3899 = vsel %vm28, %v3725, 0
  %v3902 = vsel %vm28, %v3726, 0
  %v3905 = vsel %vm28, %v3727, 0
  %v3908 = vsel %vm28, %v3728, 0
  %v3911 = vsel %vm28, %v3729, 0
  %v3914 = vsel %vm28, %v3730, 0
  %v3917 = vsel %vm28, %v3731, 0
  %v3920 = vsel %vm28, %v3732, 0
  %v3923 = vsel %vm28, %v3733, 0
  %v3926 = vsel %vm28, %v3734, 0
  %3928 = vmatprep.subr.mxu0 0.0
  %3929 = vmatpush1.msra.mxu0 %v3735
  %3930 = vmatprep.subr.mxu0 0.0
  %3931 = vmatpush1.msra.mxu0 0.0
  %3932 = vmatprep.subr.mxu0 0.0
  %3933 = vmatpush1.msra.mxu0 0.0
  %3934 = vmatprep.subr.mxu0 0.0
  %3935 = vmatpush1.msra.mxu0 0.0
  %3936 = vmatprep.subr.mxu0 0.0
  %3937 = vmatpush1.msra.mxu0 0.0
  %3938 = vmatprep.subr.mxu0 0.0
  %3939 = vmatpush1.msra.mxu0 0.0
  %3940 = vmatprep.subr.mxu0 0.0
  %3941 = vmatpush1.msra.mxu0 0.0
  %3942 = vmatprep.subr.mxu0 0.0
  %3943 = vmatpush1.msra.mxu0 0.0
  %3944 = vmatprep.subr.mxu0 0.0
  %3945 = vmatpush1.msra.mxu0 0.0
  %3946 = vmatprep.subr.mxu0 0.0
  %3947 = vmatpush1.msra.mxu0 0.0
  %3948 = vmatprep.subr.mxu0 0.0
  %3949 = vmatpush1.msra.mxu0 0.0
  %3950 = vmatprep.subr.mxu0 0.0
  %3951 = vmatpush1.msra.mxu0 0.0
  %3952 = vmatprep.subr.mxu0 0.0
  %3953 = vmatpush1.msra.mxu0 0.0
  %3954 = vmatprep.subr.mxu0 0.0
  %3955 = vmatpush1.msra.mxu0 0.0
  %3956 = vmatprep.subr.mxu0 0.0
  %3957 = vmatpush1.msra.mxu0 0.0
  %3958 = vmatprep.subr.mxu0 0.0
  %3959 = vmatpush1.msra.mxu0 0.0
  %3960 = vmatprep.subr.mxu0 0.0
  %3961 = vmatpush1.msra.mxu0 0.0
  %3962 = vmatprep.subr.mxu0 0.0
  %3963 = vmatpush1.msra.mxu0 0.0
  %3964 = vmatprep.subr.mxu0 0.0
  %3965 = vmatpush1.msra.mxu0 0.0
  %3966 = vmatprep.subr.mxu0 0.0
  %3967 = vmatpush1.msra.mxu0 0.0
  %3968 = vmatprep.subr.mxu0 0.0
  %3969 = vmatpush1.msra.mxu0 0.0
  %3970 = vmatprep.subr.mxu0 0.0
  %3971 = vmatpush1.msra.mxu0 0.0
  %3972 = vmatprep.subr.mxu0 0.0
  %3973 = vmatpush1.msra.mxu0 0.0
  %3974 = vmatprep.subr.mxu0 0.0
  %3975 = vmatpush1.msra.mxu0 0.0
  %3976 = vmatprep.subr.mxu0 0.0
  %3977 = vmatpush1.msra.mxu0 0.0
  %3978 = vmatprep.subr.mxu0 0.0
  %3979 = vmatpush1.msra.mxu0 0.0
  %3980 = vmatprep.subr.mxu0 0.0
  %3981 = vmatpush1.msra.mxu0 0.0
  %3982 = vmatprep.subr.mxu0 0.0
  %3983 = vmatpush1.msra.mxu0 0.0
  %3984 = vmatprep.subr.mxu0 0.0
  %3985 = vmatpush1.msra.mxu0 0.0
  %3986 = vmatprep.subr.mxu0 0.0
  %3987 = vmatpush1.msra.mxu0 0.0
  %3988 = vmatprep.subr.mxu0 0.0
  %3989 = vmatpush1.msra.mxu0 0.0
  %3990 = vmatprep.subr.mxu0 0.0
  %3991 = vmatpush1.msra.mxu0 0.0
  %3992 = vmatprep.mubr.f32.mxu0 0.0
  %3993 = vmatmul.mubr.f32.gmra.mrb[0].mxu0 %v3737
  %v3994 = vpop.f32.mrb[0].mxu0
  %v3995 = vadd.f32 0.0, %v3994
  %v3996 = vpop.f32.mrb[0].mxu0
  %3997 = vmatprep.mubr.f32.mxu0 0.0
  %3998 = vmatmul.mubr.f32.gmra.mrb[0].mxu0 %v3740
  %v3999 = vpop.f32.mrb[0].mxu0
  %v4000 = vadd.f32 0.0, %v3999
  %v4001 = vpop.f32.mrb[0].mxu0
  %4002 = vmatprep.mubr.f32.mxu0 0.0
  %4003 = vmatmul.mubr.f32.gmra.mrb[0].mxu0 %v3743
  %v4004 = vpop.f32.mrb[0].mxu0
  %v4005 = vadd.f32 0.0, %v4004
  %v4006 = vpop.f32.mrb[0].mxu0
  %4007 = vmatprep.mubr.f32.mxu0 0.0
  %4008 = vmatmul.mubr.f32.gmra.mrb[0].mxu0 %v3746
  %v4009 = vpop.f32.mrb[0].mxu0
  %v4010 = vadd.f32 0.0, %v4009
  %v4011 = vpop.f32.mrb[0].mxu0
  %4012 = vmatprep.mubr.f32.mxu0 0.0
  %4013 = vmatmul.mubr.f32.gmra.mrb[0].mxu0 %v3749
  %v4014 = vpop.f32.mrb[0].mxu0
  %v4015 = vadd.f32 0.0, %v4014
  %v4016 = vpop.f32.mrb[0].mxu0
  %4017 = vmatprep.mubr.f32.mxu0 0.0
  %4018 = vmatmul.mubr.f32.gmra.mrb[0].mxu0 %v3752
  %v4019 = vpop.f32.mrb[0].mxu0
  %v4020 = vadd.f32 0.0, %v4019
  %v4021 = vpop.f32.mrb[0].mxu0
  %4022 = vmatprep.mubr.f32.mxu0 0.0
  %4023 = vmatmul.mubr.f32.gmra.mrb[0].mxu0 %v3755
  %v4024 = vpop.f32.mrb[0].mxu0
  %v4025 = vadd.f32 0.0, %v4024
  %v4026 = vpop.f32.mrb[0].mxu0
  %4027 = vmatprep.mubr.f32.mxu0 0.0
  %4028 = vmatmul.mubr.f32.gmra.mrb[0].mxu0 %v3758
  %v4029 = vpop.f32.mrb[0].mxu0
  %v4030 = vadd.f32 0.0, %v4029
  %v4031 = vpop.f32.mrb[0].mxu0
  %4032 = vmatprep.mubr.f32.mxu0 0.0
  %4033 = vmatmul.mubr.f32.gmra.mrb[0].mxu0 %v3761
  %v4034 = vpop.f32.mrb[0].mxu0
  %v4035 = vadd.f32 0.0, %v4034
  %v4036 = vpop.f32.mrb[0].mxu0
  %4037 = vmatprep.mubr.f32.mxu0 0.0
  %4038 = vmatmul.mubr.f32.gmra.mrb[0].mxu0 %v3764
  %v4039 = vpop.f32.mrb[0].mxu0
  %v4040 = vadd.f32 0.0, %v4039
  %v4041 = vpop.f32.mrb[0].mxu0
  %4042 = vmatprep.mubr.f32.mxu0 0.0
  %4043 = vmatmul.mubr.f32.gmra.mrb[0].mxu0 %v3767
  %v4044 = vpop.f32.mrb[0].mxu0
  %v4045 = vadd.f32 0.0, %v4044
  %v4046 = vpop.f32.mrb[0].mxu0
  %4047 = vmatprep.mubr.f32.mxu0 0.0
  %4048 = vmatmul.mubr.f32.gmra.mrb[0].mxu0 %v3770
  %v4049 = vpop.f32.mrb[0].mxu0
  %v4050 = vadd.f32 0.0, %v4049
  %v4051 = vpop.f32.mrb[0].mxu0
  %4052 = vmatprep.mubr.f32.mxu0 0.0
  %4053 = vmatmul.mubr.f32.gmra.mrb[0].mxu0 %v3773
  %v4054 = vpop.f32.mrb[0].mxu0
  %v4055 = vadd.f32 0.0, %v4054
  %v4056 = vpop.f32.mrb[0].mxu0
  %4057 = vmatprep.mubr.f32.mxu0 0.0
  %4058 = vmatmul.mubr.f32.gmra.mrb[0].mxu0 %v3776
  %v4059 = vpop.f32.mrb[0].mxu0
  %v4060 = vadd.f32 0.0, %v4059
  %v4061 = vpop.f32.mrb[0].mxu0
  %4062 = vmatprep.mubr.f32.mxu0 0.0
  %4063 = vmatmul.mubr.f32.gmra.mrb[0].mxu0 %v3779
  %v4064 = vpop.f32.mrb[0].mxu0
  %v4065 = vadd.f32 0.0, %v4064
  %v4066 = vpop.f32.mrb[0].mxu0
  %4067 = vmatprep.mubr.f32.mxu0 0.0
  %4068 = vmatmul.mubr.f32.gmra.mrb[0].mxu0 %v3782
  %v4069 = vpop.f32.mrb[0].mxu0
  %v4070 = vadd.f32 0.0, %v4069
  %v4071 = vpop.f32.mrb[0].mxu0
  %4072 = vmatprep.mubr.f32.mxu0 0.0
  %4073 = vmatmul.mubr.f32.gmra.mrb[0].mxu0 %v3785
  %v4074 = vpop.f32.mrb[0].mxu0
  %v4075 = vadd.f32 0.0, %v4074
  %v4076 = vpop.f32.mrb[0].mxu0
  %4077 = vmatprep.mubr.f32.mxu0 0.0
  %4078 = vmatmul.mubr.f32.gmra.mrb[0].mxu0 %v3788
  %v4079 = vpop.f32.mrb[0].mxu0
  %v4080 = vadd.f32 0.0, %v4079
  %v4081 = vpop.f32.mrb[0].mxu0
  %4082 = vmatprep.mubr.f32.mxu0 0.0
  %4083 = vmatmul.mubr.f32.gmra.mrb[0].mxu0 %v3791
  %v4084 = vpop.f32.mrb[0].mxu0
  %v4085 = vadd.f32 0.0, %v4084
  %v4086 = vpop.f32.mrb[0].mxu0
  %4087 = vmatprep.mubr.f32.mxu0 0.0
  %4088 = vmatmul.mubr.f32.gmra.mrb[0].mxu0 %v3794
  %v4089 = vpop.f32.mrb[0].mxu0
  %v4090 = vadd.f32 0.0, %v4089
  %v4091 = vpop.f32.mrb[0].mxu0
  %4092 = vmatprep.mubr.f32.mxu0 0.0
  %4093 = vmatmul.mubr.f32.gmra.mrb[0].mxu0 %v3797
  %v4094 = vpop.f32.mrb[0].mxu0
  %v4095 = vadd.f32 0.0, %v4094
  %v4096 = vpop.f32.mrb[0].mxu0
  %4097 = vmatprep.mubr.f32.mxu0 0.0
  %4098 = vmatmul.mubr.f32.gmra.mrb[0].mxu0 %v3800
  %v4099 = vpop.f32.mrb[0].mxu0
  %v4100 = vadd.f32 0.0, %v4099
  %v4101 = vpop.f32.mrb[0].mxu0
  %4102 = vmatprep.mubr.f32.mxu0 0.0
  %4103 = vmatmul.mubr.f32.gmra.mrb[0].mxu0 %v3803
  %v4104 = vpop.f32.mrb[0].mxu0
  %v4105 = vadd.f32 0.0, %v4104
  %v4106 = vpop.f32.mrb[0].mxu0
  %4107 = vmatprep.mubr.f32.mxu0 0.0
  %4108 = vmatmul.mubr.f32.gmra.mrb[0].mxu0 %v3806
  %v4109 = vpop.f32.mrb[0].mxu0
  %v4110 = vadd.f32 0.0, %v4109
  %v4111 = vpop.f32.mrb[0].mxu0
  %4112 = vmatprep.mubr.f32.mxu0 0.0
  %4113 = vmatmul.mubr.f32.gmra.mrb[0].mxu0 %v3809
  %v4114 = vpop.f32.mrb[0].mxu0
  %v4115 = vadd.f32 0.0, %v4114
  %v4116 = vpop.f32.mrb[0].mxu0
  %4117 = vmatprep.mubr.f32.mxu0 0.0
  %4118 = vmatmul.mubr.f32.gmra.mrb[0].mxu0 %v3812
  %v4119 = vpop.f32.mrb[0].mxu0
  %v4120 = vadd.f32 0.0, %v4119
  %v4121 = vpop.f32.mrb[0].mxu0
  %4122 = vmatprep.mubr.f32.mxu0 0.0
  %4123 = vmatmul.mubr.f32.gmra.mrb[0].mxu0 %v3815
  %v4124 = vpop.f32.mrb[0].mxu0
  %v4125 = vadd.f32 0.0, %v4124
  %v4126 = vpop.f32.mrb[0].mxu0
  %4127 = vmatprep.mubr.f32.mxu0 0.0
  %4128 = vmatmul.mubr.f32.gmra.mrb[0].mxu0 %v3818
  %v4129 = vpop.f32.mrb[0].mxu0
  %v4130 = vadd.f32 0.0, %v4129
  %v4131 = vpop.f32.mrb[0].mxu0
  %4132 = vmatprep.mubr.f32.mxu0 0.0
  %4133 = vmatmul.mubr.f32.gmra.mrb[0].mxu0 %v3821
  %v4134 = vpop.f32.mrb[0].mxu0
  %v4135 = vadd.f32 0.0, %v4134
  %v4136 = vpop.f32.mrb[0].mxu0
  %4137 = vmatprep.mubr.f32.mxu0 0.0
  %4138 = vmatmul.mubr.f32.gmra.mrb[0].mxu0 %v3824
  %v4139 = vpop.f32.mrb[0].mxu0
  %v4140 = vadd.f32 0.0, %v4139
  %v4141 = vpop.f32.mrb[0].mxu0
  %4142 = vmatprep.mubr.f32.mxu0 0.0
  %4143 = vmatmul.mubr.f32.gmra.mrb[0].mxu0 %v3827
  %v4144 = vpop.f32.mrb[0].mxu0
  %v4145 = vadd.f32 0.0, %v4144
  %v4146 = vpop.f32.mrb[0].mxu0
  %4147 = vmatprep.mubr.f32.mxu0 0.0
  %4148 = vmatmul.mubr.f32.gmra.mrb[0].mxu0 %v3830
  %v4149 = vpop.f32.mrb[0].mxu0
  %v4150 = vadd.f32 0.0, %v4149
  %v4151 = vpop.f32.mrb[0].mxu0
  %4152 = vmatprep.mubr.f32.mxu0 0.0
  %4153 = vmatmul.mubr.f32.gmra.mrb[0].mxu0 %v3833
  %v4154 = vpop.f32.mrb[0].mxu0
  %v4155 = vadd.f32 0.0, %v4154
  %v4156 = vpop.f32.mrb[0].mxu0
  %4157 = vmatprep.mubr.f32.mxu0 0.0
  %4158 = vmatmul.mubr.f32.gmra.mrb[0].mxu0 %v3836
  %v4159 = vpop.f32.mrb[0].mxu0
  %v4160 = vadd.f32 0.0, %v4159
  %v4161 = vpop.f32.mrb[0].mxu0
  %4162 = vmatprep.mubr.f32.mxu0 0.0
  %4163 = vmatmul.mubr.f32.gmra.mrb[0].mxu0 %v3839
  %v4164 = vpop.f32.mrb[0].mxu0
  %v4165 = vadd.f32 0.0, %v4164
  %v4166 = vpop.f32.mrb[0].mxu0
  %4167 = vmatprep.mubr.f32.mxu0 0.0
  %4168 = vmatmul.mubr.f32.gmra.mrb[0].mxu0 %v3842
  %v4169 = vpop.f32.mrb[0].mxu0
  %v4170 = vadd.f32 0.0, %v4169
  %v4171 = vpop.f32.mrb[0].mxu0
  %4172 = vmatprep.mubr.f32.mxu0 0.0
  %4173 = vmatmul.mubr.f32.gmra.mrb[0].mxu0 %v3845
  %v4174 = vpop.f32.mrb[0].mxu0
  %v4175 = vadd.f32 0.0, %v4174
  %v4176 = vpop.f32.mrb[0].mxu0
  %4177 = vmatprep.mubr.f32.mxu0 0.0
  %4178 = vmatmul.mubr.f32.gmra.mrb[0].mxu0 %v3848
  %v4179 = vpop.f32.mrb[0].mxu0
  %v4180 = vadd.f32 0.0, %v4179
  %v4181 = vpop.f32.mrb[0].mxu0
  %4182 = vmatprep.mubr.f32.mxu0 0.0
  %4183 = vmatmul.mubr.f32.gmra.mrb[0].mxu0 %v3851
  %v4184 = vpop.f32.mrb[0].mxu0
  %v4185 = vadd.f32 0.0, %v4184
  %v4186 = vpop.f32.mrb[0].mxu0
  %4187 = vmatprep.mubr.f32.mxu0 0.0
  %4188 = vmatmul.mubr.f32.gmra.mrb[0].mxu0 %v3854
  %v4189 = vpop.f32.mrb[0].mxu0
  %v4190 = vadd.f32 0.0, %v4189
  %v4191 = vpop.f32.mrb[0].mxu0
  %4192 = vmatprep.mubr.f32.mxu0 0.0
  %4193 = vmatmul.mubr.f32.gmra.mrb[0].mxu0 %v3857
  %v4194 = vpop.f32.mrb[0].mxu0
  %v4195 = vadd.f32 0.0, %v4194
  %v4196 = vpop.f32.mrb[0].mxu0
  %4197 = vmatprep.mubr.f32.mxu0 0.0
  %4198 = vmatmul.mubr.f32.gmra.mrb[0].mxu0 %v3860
  %v4199 = vpop.f32.mrb[0].mxu0
  %v4200 = vadd.f32 0.0, %v4199
  %v4201 = vpop.f32.mrb[0].mxu0
  %4202 = vmatprep.mubr.f32.mxu0 0.0
  %4203 = vmatmul.mubr.f32.gmra.mrb[0].mxu0 %v3863
  %v4204 = vpop.f32.mrb[0].mxu0
  %v4205 = vadd.f32 0.0, %v4204
  %v4206 = vpop.f32.mrb[0].mxu0
  %4207 = vmatprep.mubr.f32.mxu0 0.0
  %4208 = vmatmul.mubr.f32.gmra.mrb[0].mxu0 %v3866
  %v4209 = vpop.f32.mrb[0].mxu0
  %v4210 = vadd.f32 0.0, %v4209
  %v4211 = vpop.f32.mrb[0].mxu0
  %4212 = vmatprep.mubr.f32.mxu0 0.0
  %4213 = vmatmul.mubr.f32.gmra.mrb[0].mxu0 %v3869
  %v4214 = vpop.f32.mrb[0].mxu0
  %v4215 = vadd.f32 0.0, %v4214
  %v4216 = vpop.f32.mrb[0].mxu0
  %4217 = vmatprep.mubr.f32.mxu0 0.0
  %4218 = vmatmul.mubr.f32.gmra.mrb[0].mxu0 %v3872
  %v4219 = vpop.f32.mrb[0].mxu0
  %v4220 = vadd.f32 0.0, %v4219
  %v4221 = vpop.f32.mrb[0].mxu0
  %4222 = vmatprep.mubr.f32.mxu0 0.0
  %4223 = vmatmul.mubr.f32.gmra.mrb[0].mxu0 %v3875
  %v4224 = vpop.f32.mrb[0].mxu0
  %v4225 = vadd.f32 0.0, %v4224
  %v4226 = vpop.f32.mrb[0].mxu0
  %4227 = vmatprep.mubr.f32.mxu0 0.0
  %4228 = vmatmul.mubr.f32.gmra.mrb[0].mxu0 %v3878
  %v4229 = vpop.f32.mrb[0].mxu0
  %v4230 = vadd.f32 0.0, %v4229
  %v4231 = vpop.f32.mrb[0].mxu0
  %4232 = vmatprep.mubr.f32.mxu0 0.0
  %4233 = vmatmul.mubr.f32.gmra.mrb[0].mxu0 %v3881
  %v4234 = vpop.f32.mrb[0].mxu0
  %v4235 = vadd.f32 0.0, %v4234
  %v4236 = vpop.f32.mrb[0].mxu0
  %4237 = vmatprep.mubr.f32.mxu0 0.0
  %4238 = vmatmul.mubr.f32.gmra.mrb[0].mxu0 %v3884
  %v4239 = vpop.f32.mrb[0].mxu0
  %v4240 = vadd.f32 0.0, %v4239
  %v4241 = vpop.f32.mrb[0].mxu0
  %4242 = vmatprep.mubr.f32.mxu0 0.0
  %4243 = vmatmul.mubr.f32.gmra.mrb[0].mxu0 %v3887
  %v4244 = vpop.f32.mrb[0].mxu0
  %v4245 = vadd.f32 0.0, %v4244
  %v4246 = vpop.f32.mrb[0].mxu0
  %4247 = vmatprep.mubr.f32.mxu0 0.0
  %4248 = vmatmul.mubr.f32.gmra.mrb[0].mxu0 %v3890
  %v4249 = vpop.f32.mrb[0].mxu0
  %v4250 = vadd.f32 0.0, %v4249
  %v4251 = vpop.f32.mrb[0].mxu0
  %4252 = vmatprep.mubr.f32.mxu0 0.0
  %4253 = vmatmul.mubr.f32.gmra.mrb[0].mxu0 %v3893
  %v4254 = vpop.f32.mrb[0].mxu0
  %v4255 = vadd.f32 0.0, %v4254
  %v4256 = vpop.f32.mrb[0].mxu0
  %4257 = vmatprep.mubr.f32.mxu0 0.0
  %4258 = vmatmul.mubr.f32.gmra.mrb[0].mxu0 %v3896
  %v4259 = vpop.f32.mrb[0].mxu0
  %v4260 = vadd.f32 0.0, %v4259
  %v4261 = vpop.f32.mrb[0].mxu0
  %4262 = vmatprep.mubr.f32.mxu0 0.0
  %4263 = vmatmul.mubr.f32.gmra.mrb[0].mxu0 %v3899
  %v4264 = vpop.f32.mrb[0].mxu0
  %v4265 = vadd.f32 0.0, %v4264
  %v4266 = vpop.f32.mrb[0].mxu0
  %4267 = vmatprep.mubr.f32.mxu0 0.0
  %4268 = vmatmul.mubr.f32.gmra.mrb[0].mxu0 %v3902
  %v4269 = vpop.f32.mrb[0].mxu0
  %v4270 = vadd.f32 0.0, %v4269
  %v4271 = vpop.f32.mrb[0].mxu0
  %4272 = vmatprep.mubr.f32.mxu0 0.0
  %4273 = vmatmul.mubr.f32.gmra.mrb[0].mxu0 %v3905
  %v4274 = vpop.f32.mrb[0].mxu0
  %v4275 = vadd.f32 0.0, %v4274
  %v4276 = vpop.f32.mrb[0].mxu0
  %4277 = vmatprep.mubr.f32.mxu0 0.0
  %4278 = vmatmul.mubr.f32.gmra.mrb[0].mxu0 %v3908
  %v4279 = vpop.f32.mrb[0].mxu0
  %v4280 = vadd.f32 0.0, %v4279
  %v4281 = vpop.f32.mrb[0].mxu0
  %4282 = vmatprep.mubr.f32.mxu0 0.0
  %4283 = vmatmul.mubr.f32.gmra.mrb[0].mxu0 %v3911
  %v4284 = vpop.f32.mrb[0].mxu0
  %v4285 = vadd.f32 0.0, %v4284
  %v4286 = vpop.f32.mrb[0].mxu0
  %4287 = vmatprep.mubr.f32.mxu0 0.0
  %4288 = vmatmul.mubr.f32.gmra.mrb[0].mxu0 %v3914
  %v4289 = vpop.f32.mrb[0].mxu0
  %v4290 = vadd.f32 0.0, %v4289
  %v4291 = vpop.f32.mrb[0].mxu0
  %4292 = vmatprep.mubr.f32.mxu0 0.0
  %4293 = vmatmul.mubr.f32.gmra.mrb[0].mxu0 %v3917
  %v4294 = vpop.f32.mrb[0].mxu0
  %v4295 = vadd.f32 0.0, %v4294
  %v4296 = vpop.f32.mrb[0].mxu0
  %4297 = vmatprep.mubr.f32.mxu0 0.0
  %4298 = vmatmul.mubr.f32.gmra.mrb[0].mxu0 %v3920
  %v4299 = vpop.f32.mrb[0].mxu0
  %v4300 = vadd.f32 0.0, %v4299
  %v4301 = vpop.f32.mrb[0].mxu0
  %4302 = vmatprep.mubr.f32.mxu0 0.0
  %4303 = vmatmul.mubr.f32.gmra.mrb[0].mxu0 %v3923
  %v4304 = vpop.f32.mrb[0].mxu0
  %v4305 = vadd.f32 0.0, %v4304
  %v4306 = vpop.f32.mrb[0].mxu0
  %4307 = vmatprep.mubr.f32.mxu0 0.0
  %4308 = vmatmul.mubr.f32.gmra.mrb[0].mxu0 %v3926
  %v4309 = vpop.f32.mrb[0].mxu0
  %v4310 = vadd.f32 0.0, %v4309
  %v4311 = vpop.f32.mrb[0].mxu0
  %4312 = vdwg.mxu0
  %v4313 = vadd.f32 %v3607, %v3995
  %v4314 = vadd.f32 %v3608, %v4000
  %v4315 = vadd.f32 %v3609, %v4005
  %v4316 = vadd.f32 %v3610, %v4010
  %v4317 = vadd.f32 %v3611, %v4015
  %v4318 = vadd.f32 %v3612, %v4020
  %v4319 = vadd.f32 %v3613, %v4025
  %v4320 = vadd.f32 %v3614, %v4030
  %v4321 = vadd.f32 %v3615, %v4035
  %v4322 = vadd.f32 %v3616, %v4040
  %v4323 = vadd.f32 %v3617, %v4045
  %v4324 = vadd.f32 %v3618, %v4050
  %v4325 = vadd.f32 %v3619, %v4055
  %v4326 = vadd.f32 %v3620, %v4060
  %v4327 = vadd.f32 %v3621, %v4065
  %v4328 = vadd.f32 %v3622, %v4070
  %v4329 = vadd.f32 %v3623, %v4075
  %v4330 = vadd.f32 %v3624, %v4080
  %v4331 = vadd.f32 %v3625, %v4085
  %v4332 = vadd.f32 %v3626, %v4090
  %v4333 = vadd.f32 %v3627, %v4095
  %v4334 = vadd.f32 %v3628, %v4100
  %v4335 = vadd.f32 %v3629, %v4105
  %v4336 = vadd.f32 %v3630, %v4110
  %v4337 = vadd.f32 %v3631, %v4115
  %v4338 = vadd.f32 %v3632, %v4120
  %v4339 = vadd.f32 %v3633, %v4125
  %v4340 = vadd.f32 %v3634, %v4130
  %v4341 = vadd.f32 %v3635, %v4135
  %v4342 = vadd.f32 %v3636, %v4140
  %v4343 = vadd.f32 %v3637, %v4145
  %v4344 = vadd.f32 %v3638, %v4150
  %v4345 = vadd.f32 %v3639, %v4155
  %v4346 = vadd.f32 %v3640, %v4160
  %v4347 = vadd.f32 %v3641, %v4165
  %v4348 = vadd.f32 %v3642, %v4170
  %v4349 = vadd.f32 %v3643, %v4175
  %v4350 = vadd.f32 %v3644, %v4180
  %v4351 = vadd.f32 %v3645, %v4185
  %v4352 = vadd.f32 %v3646, %v4190
  %v4353 = vadd.f32 %v3647, %v4195
  %v4354 = vadd.f32 %v3648, %v4200
  %v4355 = vadd.f32 %v3649, %v4205
  %v4356 = vadd.f32 %v3650, %v4210
  %v4357 = vadd.f32 %v3651, %v4215
  %v4358 = vadd.f32 %v3652, %v4220
  %v4359 = vadd.f32 %v3653, %v4225
  %v4360 = vadd.f32 %v3654, %v4230
  %v4361 = vadd.f32 %v3655, %v4235
  %v4362 = vadd.f32 %v3656, %v4240
  %v4363 = vadd.f32 %v3657, %v4245
  %v4364 = vadd.f32 %v3658, %v4250
  %v4365 = vadd.f32 %v3659, %v4255
  %v4366 = vadd.f32 %v3660, %v4260
  %v4367 = vadd.f32 %v3661, %v4265
  %v4368 = vadd.f32 %v3662, %v4270
  %v4369 = vadd.f32 %v3663, %v4275
  %v4370 = vadd.f32 %v3664, %v4280
  %v4371 = vadd.f32 %v3665, %v4285
  %v4372 = vadd.f32 %v3666, %v4290
  %v4373 = vadd.f32 %v3667, %v4295
  %v4374 = vadd.f32 %v3668, %v4300
  %v4375 = vadd.f32 %v3669, %v4305
  %v4376 = vadd.f32 %v3670, %v4310
  %s4377 = scalar_lea.vmem [#allocation2], 48
  %v4378 = vld [vmem:[%s4377] sm:$0xff]
  %v4379 = vld [vmem:[%s4377 + $0x8] sm:$0xff]
  %v4380 = vld [vmem:[%s4377 + $0x18] sm:$0xff]
  %v4381 = vld [vmem:[%s4377 + $0x20] sm:$0xff]
  %v4382 = vld [vmem:[%s4377 + $0x30] sm:$0xff]
  %v4383 = vld [vmem:[%s4377 + $0x38] sm:$0xff]
  %v4384 = vld [vmem:[%s4377 + $0x48] sm:$0xff]
  %v4385 = vld [vmem:[%s4377 + $0x50] sm:$0xff]
  %v4386 = vld [vmem:[%s4377 + $0x60] sm:$0xff]
  %v4387 = vld [vmem:[%s4377 + $0x68] sm:$0xff]
  %v4388 = vld [vmem:[%s4377 + $0x78] sm:$0xff]
  %v4389 = vld [vmem:[%s4377 + $0x80] sm:$0xff]
  %v4390 = vld [vmem:[%s4377 + $0x90] sm:$0xff]
  %v4391 = vld [vmem:[%s4377 + $0x98] sm:$0xff]
  %v4392 = vld [vmem:[%s4377 + $0xa8] sm:$0xff]
  %v4393 = vld [vmem:[%s4377 + $0xb0] sm:$0xff]
  %v4394 = vld [vmem:[%s4377 + $0xc0] sm:$0xff]
  %v4395 = vld [vmem:[%s4377 + $0xc8] sm:$0xff]
  %v4396 = vld [vmem:[%s4377 + $0xd8] sm:$0xff]
  %v4397 = vld [vmem:[%s4377 + $0xe0] sm:$0xff]
  %v4398 = vld [vmem:[%s4377 + $0xf0] sm:$0xff]
  %v4399 = vld [vmem:[%s4377 + $0xf8] sm:$0xff]
  %v4400 = vld [vmem:[%s4377 + $0x108] sm:$0xff]
  %v4401 = vld [vmem:[%s4377 + $0x110] sm:$0xff]
  %v4402 = vld [vmem:[%s4377 + $0x120] sm:$0xff]
  %v4403 = vld [vmem:[%s4377 + $0x128] sm:$0xff]
  %v4404 = vld [vmem:[%s4377 + $0x138] sm:$0xff]
  %v4405 = vld [vmem:[%s4377 + $0x140] sm:$0xff]
  %v4406 = vld [vmem:[%s4377 + $0x150] sm:$0xff]
  %v4407 = vld [vmem:[%s4377 + $0x158] sm:$0xff]
  %v4408 = vld [vmem:[%s4377 + $0x168] sm:$0xff]
  %v4409 = vld [vmem:[%s4377 + $0x170] sm:$0xff]
  %v4410 = vld [vmem:[%s4377 + $0x1b0] sm:$0xff]
  %v4411 = vld [vmem:[%s4377 + $0x1b8] sm:$0xff]
  %v4412 = vld [vmem:[%s4377 + $0x1c8] sm:$0xff]
  %v4413 = vld [vmem:[%s4377 + $0x1d0] sm:$0xff]
  %v4414 = vld [vmem:[%s4377 + $0x1e0] sm:$0xff]
  %v4415 = vld [vmem:[%s4377 + $0x1e8] sm:$0xff]
  %v4416 = vld [vmem:[%s4377 + $0x1f8] sm:$0xff]
  %v4417 = vld [vmem:[%s4377 + $0x200] sm:$0xff]
  %v4418 = vld [vmem:[%s4377 + $0x210] sm:$0xff]
  %v4419 = vld [vmem:[%s4377 + $0x218] sm:$0xff]
  %v4420 = vld [vmem:[%s4377 + $0x228] sm:$0xff]
  %v4421 = vld [vmem:[%s4377 + $0x230] sm:$0xff]
  %v4422 = vld [vmem:[%s4377 + $0x240] sm:$0xff]
  %v4423 = vld [vmem:[%s4377 + $0x248] sm:$0xff]
  %v4424 = vld [vmem:[%s4377 + $0x258] sm:$0xff]
  %v4425 = vld [vmem:[%s4377 + $0x260] sm:$0xff]
  %v4426 = vld [vmem:[%s4377 + $0x270] sm:$0xff]
  %v4427 = vld [vmem:[%s4377 + $0x278] sm:$0xff]
  %v4428 = vld [vmem:[%s4377 + $0x288] sm:$0xff]
  %v4429 = vld [vmem:[%s4377 + $0x290] sm:$0xff]
  %v4430 = vld [vmem:[%s4377 + $0x2a0] sm:$0xff]
  %v4431 = vld [vmem:[%s4377 + $0x2a8] sm:$0xff]
  %v4432 = vld [vmem:[%s4377 + $0x2b8] sm:$0xff]
  %v4433 = vld [vmem:[%s4377 + $0x2c0] sm:$0xff]
  %v4434 = vld [vmem:[%s4377 + $0x2d0] sm:$0xff]
  %v4435 = vld [vmem:[%s4377 + $0x2d8] sm:$0xff]
  %v4436 = vld [vmem:[%s4377 + $0x2e8] sm:$0xff]
  %v4437 = vld [vmem:[%s4377 + $0x2f0] sm:$0xff]
  %v4438 = vld [vmem:[%s4377 + $0x300] sm:$0xff]
  %v4439 = vld [vmem:[%s4377 + $0x308] sm:$0xff]
  %v4440 = vld [vmem:[%s4377 + $0x318] sm:$0xff]
  %v4441 = vld [vmem:[%s4377 + $0x320] sm:$0xff]
  %v4442 = vld [vmem:[%s1 + $0x30] sm:$0xff]
  %v4444 = vsel %vm28, %v4378, 0
  %v4447 = vsel %vm28, %v4379, 0
  %v4450 = vsel %vm28, %v4380, 0
  %v4453 = vsel %vm28, %v4381, 0
  %v4456 = vsel %vm28, %v4382, 0
  %v4459 = vsel %vm28, %v4383, 0
  %v4462 = vsel %vm28, %v4384, 0
  %v4465 = vsel %vm28, %v4385, 0
  %v4468 = vsel %vm28, %v4386, 0
  %v4471 = vsel %vm28, %v4387, 0
  %v4474 = vsel %vm28, %v4388, 0
  %v4477 = vsel %vm28, %v4389, 0
  %v4480 = vsel %vm28, %v4390, 0
  %v4483 = vsel %vm28, %v4391, 0
  %v4486 = vsel %vm28, %v4392, 0
  %v4489 = vsel %vm28, %v4393, 0
  %v4492 = vsel %vm28, %v4394, 0
  %v4495 = vsel %vm28, %v4395, 0
  %v4498 = vsel %vm28, %v4396, 0
  %v4501 = vsel %vm28, %v4397, 0
  %v4504 = vsel %vm28, %v4398, 0
  %v4507 = vsel %vm28, %v4399, 0
  %v4510 = vsel %vm28, %v4400, 0
  %v4513 = vsel %vm28, %v4401, 0
  %v4516 = vsel %vm28, %v4402, 0
  %v4519 = vsel %vm28, %v4403, 0
  %v4522 = vsel %vm28, %v4404, 0
  %v4525 = vsel %vm28, %v4405, 0
  %v4528 = vsel %vm28, %v4406, 0
  %v4531 = vsel %vm28, %v4407, 0
  %v4534 = vsel %vm28, %v4408, 0
  %v4537 = vsel %vm28, %v4409, 0
  %v4540 = vsel %vm28, %v4410, 0
  %v4543 = vsel %vm28, %v4411, 0
  %v4546 = vsel %vm28, %v4412, 0
  %v4549 = vsel %vm28, %v4413, 0
  %v4552 = vsel %vm28, %v4414, 0
  %v4555 = vsel %vm28, %v4415, 0
  %v4558 = vsel %vm28, %v4416, 0
  %v4561 = vsel %vm28, %v4417, 0
  %v4564 = vsel %vm28, %v4418, 0
  %v4567 = vsel %vm28, %v4419, 0
  %v4570 = vsel %vm28, %v4420, 0
  %v4573 = vsel %vm28, %v4421, 0
  %v4576 = vsel %vm28, %v4422, 0
  %v4579 = vsel %vm28, %v4423, 0
  %v4582 = vsel %vm28, %v4424, 0
  %v4585 = vsel %vm28, %v4425, 0
  %v4588 = vsel %vm28, %v4426, 0
  %v4591 = vsel %vm28, %v4427, 0
  %v4594 = vsel %vm28, %v4428, 0
  %v4597 = vsel %vm28, %v4429, 0
  %v4600 = vsel %vm28, %v4430, 0
  %v4603 = vsel %vm28, %v4431, 0
  %v4606 = vsel %vm28, %v4432, 0
  %v4609 = vsel %vm28, %v4433, 0
  %v4612 = vsel %vm28, %v4434, 0
  %v4615 = vsel %vm28, %v4435, 0
  %v4618 = vsel %vm28, %v4436, 0
  %v4621 = vsel %vm28, %v4437, 0
  %v4624 = vsel %vm28, %v4438, 0
  %v4627 = vsel %vm28, %v4439, 0
  %v4630 = vsel %vm28, %v4440, 0
  %v4633 = vsel %vm28, %v4441, 0
  %4635 = vmatprep.subr.mxu0 0.0
  %4636 = vmatpush1.msra.mxu0 %v4442
  %4637 = vmatprep.subr.mxu0 0.0
  %4638 = vmatpush1.msra.mxu0 0.0
  %4639 = vmatprep.subr.mxu0 0.0
  %4640 = vmatpush1.msra.mxu0 0.0
  %4641 = vmatprep.subr.mxu0 0.0
  %4642 = vmatpush1.msra.mxu0 0.0
  %4643 = vmatprep.subr.mxu0 0.0
  %4644 = vmatpush1.msra.mxu0 0.0
  %4645 = vmatprep.subr.mxu0 0.0
  %4646 = vmatpush1.msra.mxu0 0.0
  %4647 = vmatprep.subr.mxu0 0.0
  %4648 = vmatpush1.msra.mxu0 0.0
  %4649 = vmatprep.subr.mxu0 0.0
  %4650 = vmatpush1.msra.mxu0 0.0
  %4651 = vmatprep.subr.mxu0 0.0
  %4652 = vmatpush1.msra.mxu0 0.0
  %4653 = vmatprep.subr.mxu0 0.0
  %4654 = vmatpush1.msra.mxu0 0.0
  %4655 = vmatprep.subr.mxu0 0.0
  %4656 = vmatpush1.msra.mxu0 0.0
  %4657 = vmatprep.subr.mxu0 0.0
  %4658 = vmatpush1.msra.mxu0 0.0
  %4659 = vmatprep.subr.mxu0 0.0
  %4660 = vmatpush1.msra.mxu0 0.0
  %4661 = vmatprep.subr.mxu0 0.0
  %4662 = vmatpush1.msra.mxu0 0.0
  %4663 = vmatprep.subr.mxu0 0.0
  %4664 = vmatpush1.msra.mxu0 0.0
  %4665 = vmatprep.subr.mxu0 0.0
  %4666 = vmatpush1.msra.mxu0 0.0
  %4667 = vmatprep.subr.mxu0 0.0
  %4668 = vmatpush1.msra.mxu0 0.0
  %4669 = vmatprep.subr.mxu0 0.0
  %4670 = vmatpush1.msra.mxu0 0.0
  %4671 = vmatprep.subr.mxu0 0.0
  %4672 = vmatpush1.msra.mxu0 0.0
  %4673 = vmatprep.subr.mxu0 0.0
  %4674 = vmatpush1.msra.mxu0 0.0
  %4675 = vmatprep.subr.mxu0 0.0
  %4676 = vmatpush1.msra.mxu0 0.0
  %4677 = vmatprep.subr.mxu0 0.0
  %4678 = vmatpush1.msra.mxu0 0.0
  %4679 = vmatprep.subr.mxu0 0.0
  %4680 = vmatpush1.msra.mxu0 0.0
  %4681 = vmatprep.subr.mxu0 0.0
  %4682 = vmatpush1.msra.mxu0 0.0
  %4683 = vmatprep.subr.mxu0 0.0
  %4684 = vmatpush1.msra.mxu0 0.0
  %4685 = vmatprep.subr.mxu0 0.0
  %4686 = vmatpush1.msra.mxu0 0.0
  %4687 = vmatprep.subr.mxu0 0.0
  %4688 = vmatpush1.msra.mxu0 0.0
  %4689 = vmatprep.subr.mxu0 0.0
  %4690 = vmatpush1.msra.mxu0 0.0
  %4691 = vmatprep.subr.mxu0 0.0
  %4692 = vmatpush1.msra.mxu0 0.0
  %4693 = vmatprep.subr.mxu0 0.0
  %4694 = vmatpush1.msra.mxu0 0.0
  %4695 = vmatprep.subr.mxu0 0.0
  %4696 = vmatpush1.msra.mxu0 0.0
  %4697 = vmatprep.subr.mxu0 0.0
  %4698 = vmatpush1.msra.mxu0 0.0
  %4699 = vmatprep.mubr.f32.mxu0 0.0
  %4700 = vmatmul.mubr.f32.gmra.mrb[0].mxu0 %v4444
  %v4701 = vpop.f32.mrb[0].mxu0
  %v4702 = vadd.f32 0.0, %v4701
  %v4703 = vpop.f32.mrb[0].mxu0
  %4704 = vmatprep.mubr.f32.mxu0 0.0
  %4705 = vmatmul.mubr.f32.gmra.mrb[0].mxu0 %v4447
  %v4706 = vpop.f32.mrb[0].mxu0
  %v4707 = vadd.f32 0.0, %v4706
  %v4708 = vpop.f32.mrb[0].mxu0
  %4709 = vmatprep.mubr.f32.mxu0 0.0
  %4710 = vmatmul.mubr.f32.gmra.mrb[0].mxu0 %v4450
  %v4711 = vpop.f32.mrb[0].mxu0
  %v4712 = vadd.f32 0.0, %v4711
  %v4713 = vpop.f32.mrb[0].mxu0
  %4714 = vmatprep.mubr.f32.mxu0 0.0
  %4715 = vmatmul.mubr.f32.gmra.mrb[0].mxu0 %v4453
  %v4716 = vpop.f32.mrb[0].mxu0
  %v4717 = vadd.f32 0.0, %v4716
  %v4718 = vpop.f32.mrb[0].mxu0
  %4719 = vmatprep.mubr.f32.mxu0 0.0
  %4720 = vmatmul.mubr.f32.gmra.mrb[0].mxu0 %v4456
  %v4721 = vpop.f32.mrb[0].mxu0
  %v4722 = vadd.f32 0.0, %v4721
  %v4723 = vpop.f32.mrb[0].mxu0
  %4724 = vmatprep.mubr.f32.mxu0 0.0
  %4725 = vmatmul.mubr.f32.gmra.mrb[0].mxu0 %v4459
  %v4726 = vpop.f32.mrb[0].mxu0
  %v4727 = vadd.f32 0.0, %v4726
  %v4728 = vpop.f32.mrb[0].mxu0
  %4729 = vmatprep.mubr.f32.mxu0 0.0
  %4730 = vmatmul.mubr.f32.gmra.mrb[0].mxu0 %v4462
  %v4731 = vpop.f32.mrb[0].mxu0
  %v4732 = vadd.f32 0.0, %v4731
  %v4733 = vpop.f32.mrb[0].mxu0
  %4734 = vmatprep.mubr.f32.mxu0 0.0
  %4735 = vmatmul.mubr.f32.gmra.mrb[0].mxu0 %v4465
  %v4736 = vpop.f32.mrb[0].mxu0
  %v4737 = vadd.f32 0.0, %v4736
  %v4738 = vpop.f32.mrb[0].mxu0
  %4739 = vmatprep.mubr.f32.mxu0 0.0
  %4740 = vmatmul.mubr.f32.gmra.mrb[0].mxu0 %v4468
  %v4741 = vpop.f32.mrb[0].mxu0
  %v4742 = vadd.f32 0.0, %v4741
  %v4743 = vpop.f32.mrb[0].mxu0
  %4744 = vmatprep.mubr.f32.mxu0 0.0
  %4745 = vmatmul.mubr.f32.gmra.mrb[0].mxu0 %v4471
  %v4746 = vpop.f32.mrb[0].mxu0
  %v4747 = vadd.f32 0.0, %v4746
  %v4748 = vpop.f32.mrb[0].mxu0
  %4749 = vmatprep.mubr.f32.mxu0 0.0
  %4750 = vmatmul.mubr.f32.gmra.mrb[0].mxu0 %v4474
  %v4751 = vpop.f32.mrb[0].mxu0
  %v4752 = vadd.f32 0.0, %v4751
  %v4753 = vpop.f32.mrb[0].mxu0
  %4754 = vmatprep.mubr.f32.mxu0 0.0
  %4755 = vmatmul.mubr.f32.gmra.mrb[0].mxu0 %v4477
  %v4756 = vpop.f32.mrb[0].mxu0
  %v4757 = vadd.f32 0.0, %v4756
  %v4758 = vpop.f32.mrb[0].mxu0
  %4759 = vmatprep.mubr.f32.mxu0 0.0
  %4760 = vmatmul.mubr.f32.gmra.mrb[0].mxu0 %v4480
  %v4761 = vpop.f32.mrb[0].mxu0
  %v4762 = vadd.f32 0.0, %v4761
  %v4763 = vpop.f32.mrb[0].mxu0
  %4764 = vmatprep.mubr.f32.mxu0 0.0
  %4765 = vmatmul.mubr.f32.gmra.mrb[0].mxu0 %v4483
  %v4766 = vpop.f32.mrb[0].mxu0
  %v4767 = vadd.f32 0.0, %v4766
  %v4768 = vpop.f32.mrb[0].mxu0
  %4769 = vmatprep.mubr.f32.mxu0 0.0
  %4770 = vmatmul.mubr.f32.gmra.mrb[0].mxu0 %v4486
  %v4771 = vpop.f32.mrb[0].mxu0
  %v4772 = vadd.f32 0.0, %v4771
  %v4773 = vpop.f32.mrb[0].mxu0
  %4774 = vmatprep.mubr.f32.mxu0 0.0
  %4775 = vmatmul.mubr.f32.gmra.mrb[0].mxu0 %v4489
  %v4776 = vpop.f32.mrb[0].mxu0
  %v4777 = vadd.f32 0.0, %v4776
  %v4778 = vpop.f32.mrb[0].mxu0
  %4779 = vmatprep.mubr.f32.mxu0 0.0
  %4780 = vmatmul.mubr.f32.gmra.mrb[0].mxu0 %v4492
  %v4781 = vpop.f32.mrb[0].mxu0
  %v4782 = vadd.f32 0.0, %v4781
  %v4783 = vpop.f32.mrb[0].mxu0
  %4784 = vmatprep.mubr.f32.mxu0 0.0
  %4785 = vmatmul.mubr.f32.gmra.mrb[0].mxu0 %v4495
  %v4786 = vpop.f32.mrb[0].mxu0
  %v4787 = vadd.f32 0.0, %v4786
  %v4788 = vpop.f32.mrb[0].mxu0
  %4789 = vmatprep.mubr.f32.mxu0 0.0
  %4790 = vmatmul.mubr.f32.gmra.mrb[0].mxu0 %v4498
  %v4791 = vpop.f32.mrb[0].mxu0
  %v4792 = vadd.f32 0.0, %v4791
  %v4793 = vpop.f32.mrb[0].mxu0
  %4794 = vmatprep.mubr.f32.mxu0 0.0
  %4795 = vmatmul.mubr.f32.gmra.mrb[0].mxu0 %v4501
  %v4796 = vpop.f32.mrb[0].mxu0
  %v4797 = vadd.f32 0.0, %v4796
  %v4798 = vpop.f32.mrb[0].mxu0
  %4799 = vmatprep.mubr.f32.mxu0 0.0
  %4800 = vmatmul.mubr.f32.gmra.mrb[0].mxu0 %v4504
  %v4801 = vpop.f32.mrb[0].mxu0
  %v4802 = vadd.f32 0.0, %v4801
  %v4803 = vpop.f32.mrb[0].mxu0
  %4804 = vmatprep.mubr.f32.mxu0 0.0
  %4805 = vmatmul.mubr.f32.gmra.mrb[0].mxu0 %v4507
  %v4806 = vpop.f32.mrb[0].mxu0
  %v4807 = vadd.f32 0.0, %v4806
  %v4808 = vpop.f32.mrb[0].mxu0
  %4809 = vmatprep.mubr.f32.mxu0 0.0
  %4810 = vmatmul.mubr.f32.gmra.mrb[0].mxu0 %v4510
  %v4811 = vpop.f32.mrb[0].mxu0
  %v4812 = vadd.f32 0.0, %v4811
  %v4813 = vpop.f32.mrb[0].mxu0
  %4814 = vmatprep.mubr.f32.mxu0 0.0
  %4815 = vmatmul.mubr.f32.gmra.mrb[0].mxu0 %v4513
  %v4816 = vpop.f32.mrb[0].mxu0
  %v4817 = vadd.f32 0.0, %v4816
  %v4818 = vpop.f32.mrb[0].mxu0
  %4819 = vmatprep.mubr.f32.mxu0 0.0
  %4820 = vmatmul.mubr.f32.gmra.mrb[0].mxu0 %v4516
  %v4821 = vpop.f32.mrb[0].mxu0
  %v4822 = vadd.f32 0.0, %v4821
  %v4823 = vpop.f32.mrb[0].mxu0
  %4824 = vmatprep.mubr.f32.mxu0 0.0
  %4825 = vmatmul.mubr.f32.gmra.mrb[0].mxu0 %v4519
  %v4826 = vpop.f32.mrb[0].mxu0
  %v4827 = vadd.f32 0.0, %v4826
  %v4828 = vpop.f32.mrb[0].mxu0
  %4829 = vmatprep.mubr.f32.mxu0 0.0
  %4830 = vmatmul.mubr.f32.gmra.mrb[0].mxu0 %v4522
  %v4831 = vpop.f32.mrb[0].mxu0
  %v4832 = vadd.f32 0.0, %v4831
  %v4833 = vpop.f32.mrb[0].mxu0
  %4834 = vmatprep.mubr.f32.mxu0 0.0
  %4835 = vmatmul.mubr.f32.gmra.mrb[0].mxu0 %v4525
  %v4836 = vpop.f32.mrb[0].mxu0
  %v4837 = vadd.f32 0.0, %v4836
  %v4838 = vpop.f32.mrb[0].mxu0
  %4839 = vmatprep.mubr.f32.mxu0 0.0
  %4840 = vmatmul.mubr.f32.gmra.mrb[0].mxu0 %v4528
  %v4841 = vpop.f32.mrb[0].mxu0
  %v4842 = vadd.f32 0.0, %v4841
  %v4843 = vpop.f32.mrb[0].mxu0
  %4844 = vmatprep.mubr.f32.mxu0 0.0
  %4845 = vmatmul.mubr.f32.gmra.mrb[0].mxu0 %v4531
  %v4846 = vpop.f32.mrb[0].mxu0
  %v4847 = vadd.f32 0.0, %v4846
  %v4848 = vpop.f32.mrb[0].mxu0
  %4849 = vmatprep.mubr.f32.mxu0 0.0
  %4850 = vmatmul.mubr.f32.gmra.mrb[0].mxu0 %v4534
  %v4851 = vpop.f32.mrb[0].mxu0
  %v4852 = vadd.f32 0.0, %v4851
  %v4853 = vpop.f32.mrb[0].mxu0
  %4854 = vmatprep.mubr.f32.mxu0 0.0
  %4855 = vmatmul.mubr.f32.gmra.mrb[0].mxu0 %v4537
  %v4856 = vpop.f32.mrb[0].mxu0
  %v4857 = vadd.f32 0.0, %v4856
  %v4858 = vpop.f32.mrb[0].mxu0
  %4859 = vmatprep.mubr.f32.mxu0 0.0
  %4860 = vmatmul.mubr.f32.gmra.mrb[0].mxu0 %v4540
  %v4861 = vpop.f32.mrb[0].mxu0
  %v4862 = vadd.f32 0.0, %v4861
  %v4863 = vpop.f32.mrb[0].mxu0
  %4864 = vmatprep.mubr.f32.mxu0 0.0
  %4865 = vmatmul.mubr.f32.gmra.mrb[0].mxu0 %v4543
  %v4866 = vpop.f32.mrb[0].mxu0
  %v4867 = vadd.f32 0.0, %v4866
  %v4868 = vpop.f32.mrb[0].mxu0
  %4869 = vmatprep.mubr.f32.mxu0 0.0
  %4870 = vmatmul.mubr.f32.gmra.mrb[0].mxu0 %v4546
  %v4871 = vpop.f32.mrb[0].mxu0
  %v4872 = vadd.f32 0.0, %v4871
  %v4873 = vpop.f32.mrb[0].mxu0
  %4874 = vmatprep.mubr.f32.mxu0 0.0
  %4875 = vmatmul.mubr.f32.gmra.mrb[0].mxu0 %v4549
  %v4876 = vpop.f32.mrb[0].mxu0
  %v4877 = vadd.f32 0.0, %v4876
  %v4878 = vpop.f32.mrb[0].mxu0
  %4879 = vmatprep.mubr.f32.mxu0 0.0
  %4880 = vmatmul.mubr.f32.gmra.mrb[0].mxu0 %v4552
  %v4881 = vpop.f32.mrb[0].mxu0
  %v4882 = vadd.f32 0.0, %v4881
  %v4883 = vpop.f32.mrb[0].mxu0
  %4884 = vmatprep.mubr.f32.mxu0 0.0
  %4885 = vmatmul.mubr.f32.gmra.mrb[0].mxu0 %v4555
  %v4886 = vpop.f32.mrb[0].mxu0
  %v4887 = vadd.f32 0.0, %v4886
  %v4888 = vpop.f32.mrb[0].mxu0
  %4889 = vmatprep.mubr.f32.mxu0 0.0
  %4890 = vmatmul.mubr.f32.gmra.mrb[0].mxu0 %v4558
  %v4891 = vpop.f32.mrb[0].mxu0
  %v4892 = vadd.f32 0.0, %v4891
  %v4893 = vpop.f32.mrb[0].mxu0
  %4894 = vmatprep.mubr.f32.mxu0 0.0
  %4895 = vmatmul.mubr.f32.gmra.mrb[0].mxu0 %v4561
  %v4896 = vpop.f32.mrb[0].mxu0
  %v4897 = vadd.f32 0.0, %v4896
  %v4898 = vpop.f32.mrb[0].mxu0
  %4899 = vmatprep.mubr.f32.mxu0 0.0
  %4900 = vmatmul.mubr.f32.gmra.mrb[0].mxu0 %v4564
  %v4901 = vpop.f32.mrb[0].mxu0
  %v4902 = vadd.f32 0.0, %v4901
  %v4903 = vpop.f32.mrb[0].mxu0
  %4904 = vmatprep.mubr.f32.mxu0 0.0
  %4905 = vmatmul.mubr.f32.gmra.mrb[0].mxu0 %v4567
  %v4906 = vpop.f32.mrb[0].mxu0
  %v4907 = vadd.f32 0.0, %v4906
  %v4908 = vpop.f32.mrb[0].mxu0
  %4909 = vmatprep.mubr.f32.mxu0 0.0
  %4910 = vmatmul.mubr.f32.gmra.mrb[0].mxu0 %v4570
  %v4911 = vpop.f32.mrb[0].mxu0
  %v4912 = vadd.f32 0.0, %v4911
  %v4913 = vpop.f32.mrb[0].mxu0
  %4914 = vmatprep.mubr.f32.mxu0 0.0
  %4915 = vmatmul.mubr.f32.gmra.mrb[0].mxu0 %v4573
  %v4916 = vpop.f32.mrb[0].mxu0
  %v4917 = vadd.f32 0.0, %v4916
  %v4918 = vpop.f32.mrb[0].mxu0
  %4919 = vmatprep.mubr.f32.mxu0 0.0
  %4920 = vmatmul.mubr.f32.gmra.mrb[0].mxu0 %v4576
  %v4921 = vpop.f32.mrb[0].mxu0
  %v4922 = vadd.f32 0.0, %v4921
  %v4923 = vpop.f32.mrb[0].mxu0
  %4924 = vmatprep.mubr.f32.mxu0 0.0
  %4925 = vmatmul.mubr.f32.gmra.mrb[0].mxu0 %v4579
  %v4926 = vpop.f32.mrb[0].mxu0
  %v4927 = vadd.f32 0.0, %v4926
  %v4928 = vpop.f32.mrb[0].mxu0
  %4929 = vmatprep.mubr.f32.mxu0 0.0
  %4930 = vmatmul.mubr.f32.gmra.mrb[0].mxu0 %v4582
  %v4931 = vpop.f32.mrb[0].mxu0
  %v4932 = vadd.f32 0.0, %v4931
  %v4933 = vpop.f32.mrb[0].mxu0
  %4934 = vmatprep.mubr.f32.mxu0 0.0
  %4935 = vmatmul.mubr.f32.gmra.mrb[0].mxu0 %v4585
  %v4936 = vpop.f32.mrb[0].mxu0
  %v4937 = vadd.f32 0.0, %v4936
  %v4938 = vpop.f32.mrb[0].mxu0
  %4939 = vmatprep.mubr.f32.mxu0 0.0
  %4940 = vmatmul.mubr.f32.gmra.mrb[0].mxu0 %v4588
  %v4941 = vpop.f32.mrb[0].mxu0
  %v4942 = vadd.f32 0.0, %v4941
  %v4943 = vpop.f32.mrb[0].mxu0
  %4944 = vmatprep.mubr.f32.mxu0 0.0
  %4945 = vmatmul.mubr.f32.gmra.mrb[0].mxu0 %v4591
  %v4946 = vpop.f32.mrb[0].mxu0
  %v4947 = vadd.f32 0.0, %v4946
  %v4948 = vpop.f32.mrb[0].mxu0
  %4949 = vmatprep.mubr.f32.mxu0 0.0
  %4950 = vmatmul.mubr.f32.gmra.mrb[0].mxu0 %v4594
  %v4951 = vpop.f32.mrb[0].mxu0
  %v4952 = vadd.f32 0.0, %v4951
  %v4953 = vpop.f32.mrb[0].mxu0
  %4954 = vmatprep.mubr.f32.mxu0 0.0
  %4955 = vmatmul.mubr.f32.gmra.mrb[0].mxu0 %v4597
  %v4956 = vpop.f32.mrb[0].mxu0
  %v4957 = vadd.f32 0.0, %v4956
  %v4958 = vpop.f32.mrb[0].mxu0
  %4959 = vmatprep.mubr.f32.mxu0 0.0
  %4960 = vmatmul.mubr.f32.gmra.mrb[0].mxu0 %v4600
  %v4961 = vpop.f32.mrb[0].mxu0
  %v4962 = vadd.f32 0.0, %v4961
  %v4963 = vpop.f32.mrb[0].mxu0
  %4964 = vmatprep.mubr.f32.mxu0 0.0
  %4965 = vmatmul.mubr.f32.gmra.mrb[0].mxu0 %v4603
  %v4966 = vpop.f32.mrb[0].mxu0
  %v4967 = vadd.f32 0.0, %v4966
  %v4968 = vpop.f32.mrb[0].mxu0
  %4969 = vmatprep.mubr.f32.mxu0 0.0
  %4970 = vmatmul.mubr.f32.gmra.mrb[0].mxu0 %v4606
  %v4971 = vpop.f32.mrb[0].mxu0
  %v4972 = vadd.f32 0.0, %v4971
  %v4973 = vpop.f32.mrb[0].mxu0
  %4974 = vmatprep.mubr.f32.mxu0 0.0
  %4975 = vmatmul.mubr.f32.gmra.mrb[0].mxu0 %v4609
  %v4976 = vpop.f32.mrb[0].mxu0
  %v4977 = vadd.f32 0.0, %v4976
  %v4978 = vpop.f32.mrb[0].mxu0
  %4979 = vmatprep.mubr.f32.mxu0 0.0
  %4980 = vmatmul.mubr.f32.gmra.mrb[0].mxu0 %v4612
  %v4981 = vpop.f32.mrb[0].mxu0
  %v4982 = vadd.f32 0.0, %v4981
  %v4983 = vpop.f32.mrb[0].mxu0
  %4984 = vmatprep.mubr.f32.mxu0 0.0
  %4985 = vmatmul.mubr.f32.gmra.mrb[0].mxu0 %v4615
  %v4986 = vpop.f32.mrb[0].mxu0
  %v4987 = vadd.f32 0.0, %v4986
  %v4988 = vpop.f32.mrb[0].mxu0
  %4989 = vmatprep.mubr.f32.mxu0 0.0
  %4990 = vmatmul.mubr.f32.gmra.mrb[0].mxu0 %v4618
  %v4991 = vpop.f32.mrb[0].mxu0
  %v4992 = vadd.f32 0.0, %v4991
  %v4993 = vpop.f32.mrb[0].mxu0
  %4994 = vmatprep.mubr.f32.mxu0 0.0
  %4995 = vmatmul.mubr.f32.gmra.mrb[0].mxu0 %v4621
  %v4996 = vpop.f32.mrb[0].mxu0
  %v4997 = vadd.f32 0.0, %v4996
  %v4998 = vpop.f32.mrb[0].mxu0
  %4999 = vmatprep.mubr.f32.mxu0 0.0
  %5000 = vmatmul.mubr.f32.gmra.mrb[0].mxu0 %v4624
  %v5001 = vpop.f32.mrb[0].mxu0
  %v5002 = vadd.f32 0.0, %v5001
  %v5003 = vpop.f32.mrb[0].mxu0
  %5004 = vmatprep.mubr.f32.mxu0 0.0
  %5005 = vmatmul.mubr.f32.gmra.mrb[0].mxu0 %v4627
  %v5006 = vpop.f32.mrb[0].mxu0
  %v5007 = vadd.f32 0.0, %v5006
  %v5008 = vpop.f32.mrb[0].mxu0
  %5009 = vmatprep.mubr.f32.mxu0 0.0
  %5010 = vmatmul.mubr.f32.gmra.mrb[0].mxu0 %v4630
  %v5011 = vpop.f32.mrb[0].mxu0
  %v5012 = vadd.f32 0.0, %v5011
  %v5013 = vpop.f32.mrb[0].mxu0
  %5014 = vmatprep.mubr.f32.mxu0 0.0
  %5015 = vmatmul.mubr.f32.gmra.mrb[0].mxu0 %v4633
  %v5016 = vpop.f32.mrb[0].mxu0
  %v5017 = vadd.f32 0.0, %v5016
  %v5018 = vpop.f32.mrb[0].mxu0
  %5019 = vdwg.mxu0
  %v5020 = vadd.f32 %v4313, %v4702
  %v5021 = vadd.f32 %v4314, %v4707
  %v5022 = vadd.f32 %v4315, %v4712
  %v5023 = vadd.f32 %v4316, %v4717
  %v5024 = vadd.f32 %v4317, %v4722
  %v5025 = vadd.f32 %v4318, %v4727
  %v5026 = vadd.f32 %v4319, %v4732
  %v5027 = vadd.f32 %v4320, %v4737
  %v5028 = vadd.f32 %v4321, %v4742
  %v5029 = vadd.f32 %v4322, %v4747
  %v5030 = vadd.f32 %v4323, %v4752
  %v5031 = vadd.f32 %v4324, %v4757
  %v5032 = vadd.f32 %v4325, %v4762
  %v5033 = vadd.f32 %v4326, %v4767
  %v5034 = vadd.f32 %v4327, %v4772
  %v5035 = vadd.f32 %v4328, %v4777
  %v5036 = vadd.f32 %v4329, %v4782
  %v5037 = vadd.f32 %v4330, %v4787
  %v5038 = vadd.f32 %v4331, %v4792
  %v5039 = vadd.f32 %v4332, %v4797
  %v5040 = vadd.f32 %v4333, %v4802
  %v5041 = vadd.f32 %v4334, %v4807
  %v5042 = vadd.f32 %v4335, %v4812
  %v5043 = vadd.f32 %v4336, %v4817
  %v5044 = vadd.f32 %v4337, %v4822
  %v5045 = vadd.f32 %v4338, %v4827
  %v5046 = vadd.f32 %v4339, %v4832
  %v5047 = vadd.f32 %v4340, %v4837
  %v5048 = vadd.f32 %v4341, %v4842
  %v5049 = vadd.f32 %v4342, %v4847
  %v5050 = vadd.f32 %v4343, %v4852
  %v5051 = vadd.f32 %v4344, %v4857
  %v5052 = vadd.f32 %v4345, %v4862
  %v5053 = vadd.f32 %v4346, %v4867
  %v5054 = vadd.f32 %v4347, %v4872
  %v5055 = vadd.f32 %v4348, %v4877
  %v5056 = vadd.f32 %v4349, %v4882
  %v5057 = vadd.f32 %v4350, %v4887
  %v5058 = vadd.f32 %v4351, %v4892
  %v5059 = vadd.f32 %v4352, %v4897
  %v5060 = vadd.f32 %v4353, %v4902
  %v5061 = vadd.f32 %v4354, %v4907
  %v5062 = vadd.f32 %v4355, %v4912
  %v5063 = vadd.f32 %v4356, %v4917
  %v5064 = vadd.f32 %v4357, %v4922
  %v5065 = vadd.f32 %v4358, %v4927
  %v5066 = vadd.f32 %v4359, %v4932
  %v5067 = vadd.f32 %v4360, %v4937
  %v5068 = vadd.f32 %v4361, %v4942
  %v5069 = vadd.f32 %v4362, %v4947
  %v5070 = vadd.f32 %v4363, %v4952
  %v5071 = vadd.f32 %v4364, %v4957
  %v5072 = vadd.f32 %v4365, %v4962
  %v5073 = vadd.f32 %v4366, %v4967
  %v5074 = vadd.f32 %v4367, %v4972
  %v5075 = vadd.f32 %v4368, %v4977
  %v5076 = vadd.f32 %v4369, %v4982
  %v5077 = vadd.f32 %v4370, %v4987
  %v5078 = vadd.f32 %v4371, %v4992
  %v5079 = vadd.f32 %v4372, %v4997
  %v5080 = vadd.f32 %v4373, %v5002
  %v5081 = vadd.f32 %v4374, %v5007
  %v5082 = vadd.f32 %v4375, %v5012
  %v5083 = vadd.f32 %v4376, %v5017
  %v5084 = vld [vmem:[%s4377 + $0x1] sm:$0xff]
  %v5085 = vld [vmem:[%s4377 + $0x9] sm:$0xff]
  %v5086 = vld [vmem:[%s4377 + $0x19] sm:$0xff]
  %v5087 = vld [vmem:[%s4377 + $0x21] sm:$0xff]
  %v5088 = vld [vmem:[%s4377 + $0x31] sm:$0xff]
  %v5089 = vld [vmem:[%s4377 + $0x39] sm:$0xff]
  %v5090 = vld [vmem:[%s4377 + $0x49] sm:$0xff]
  %v5091 = vld [vmem:[%s4377 + $0x51] sm:$0xff]
  %v5092 = vld [vmem:[%s4377 + $0x61] sm:$0xff]
  %v5093 = vld [vmem:[%s4377 + $0x69] sm:$0xff]
  %v5094 = vld [vmem:[%s4377 + $0x79] sm:$0xff]
  %v5095 = vld [vmem:[%s4377 + $0x81] sm:$0xff]
  %v5096 = vld [vmem:[%s4377 + $0x91] sm:$0xff]
  %v5097 = vld [vmem:[%s4377 + $0x99] sm:$0xff]
  %v5098 = vld [vmem:[%s4377 + $0xa9] sm:$0xff]
  %v5099 = vld [vmem:[%s4377 + $0xb1] sm:$0xff]
  %v5100 = vld [vmem:[%s4377 + $0xc1] sm:$0xff]
  %v5101 = vld [vmem:[%s4377 + $0xc9] sm:$0xff]
  %v5102 = vld [vmem:[%s4377 + $0xd9] sm:$0xff]
  %v5103 = vld [vmem:[%s4377 + $0xe1] sm:$0xff]
  %v5104 = vld [vmem:[%s4377 + $0xf1] sm:$0xff]
  %v5105 = vld [vmem:[%s4377 + $0xf9] sm:$0xff]
  %v5106 = vld [vmem:[%s4377 + $0x109] sm:$0xff]
  %v5107 = vld [vmem:[%s4377 + $0x111] sm:$0xff]
  %v5108 = vld [vmem:[%s4377 + $0x121] sm:$0xff]
  %v5109 = vld [vmem:[%s4377 + $0x129] sm:$0xff]
  %v5110 = vld [vmem:[%s4377 + $0x139] sm:$0xff]
  %v5111 = vld [vmem:[%s4377 + $0x141] sm:$0xff]
  %v5112 = vld [vmem:[%s4377 + $0x151] sm:$0xff]
  %v5113 = vld [vmem:[%s4377 + $0x159] sm:$0xff]
  %v5114 = vld [vmem:[%s4377 + $0x169] sm:$0xff]
  %v5115 = vld [vmem:[%s4377 + $0x171] sm:$0xff]
  %v5116 = vld [vmem:[%s4377 + $0x1b1] sm:$0xff]
  %v5117 = vld [vmem:[%s4377 + $0x1b9] sm:$0xff]
  %v5118 = vld [vmem:[%s4377 + $0x1c9] sm:$0xff]
  %v5119 = vld [vmem:[%s4377 + $0x1d1] sm:$0xff]
  %v5120 = vld [vmem:[%s4377 + $0x1e1] sm:$0xff]
  %v5121 = vld [vmem:[%s4377 + $0x1e9] sm:$0xff]
  %v5122 = vld [vmem:[%s4377 + $0x1f9] sm:$0xff]
  %v5123 = vld [vmem:[%s4377 + $0x201] sm:$0xff]
  %v5124 = vld [vmem:[%s4377 + $0x211] sm:$0xff]
  %v5125 = vld [vmem:[%s4377 + $0x219] sm:$0xff]
  %v5126 = vld [vmem:[%s4377 + $0x229] sm:$0xff]
  %v5127 = vld [vmem:[%s4377 + $0x231] sm:$0xff]
  %v5128 = vld [vmem:[%s4377 + $0x241] sm:$0xff]
  %v5129 = vld [vmem:[%s4377 + $0x249] sm:$0xff]
  %v5130 = vld [vmem:[%s4377 + $0x259] sm:$0xff]
  %v5131 = vld [vmem:[%s4377 + $0x261] sm:$0xff]
  %v5132 = vld [vmem:[%s4377 + $0x271] sm:$0xff]
  %v5133 = vld [vmem:[%s4377 + $0x279] sm:$0xff]
  %v5134 = vld [vmem:[%s4377 + $0x289] sm:$0xff]
  %v5135 = vld [vmem:[%s4377 + $0x291] sm:$0xff]
  %v5136 = vld [vmem:[%s4377 + $0x2a1] sm:$0xff]
  %v5137 = vld [vmem:[%s4377 + $0x2a9] sm:$0xff]
  %v5138 = vld [vmem:[%s4377 + $0x2b9] sm:$0xff]
  %v5139 = vld [vmem:[%s4377 + $0x2c1] sm:$0xff]
  %v5140 = vld [vmem:[%s4377 + $0x2d1] sm:$0xff]
  %v5141 = vld [vmem:[%s4377 + $0x2d9] sm:$0xff]
  %v5142 = vld [vmem:[%s4377 + $0x2e9] sm:$0xff]
  %v5143 = vld [vmem:[%s4377 + $0x2f1] sm:$0xff]
  %v5144 = vld [vmem:[%s4377 + $0x301] sm:$0xff]
  %v5145 = vld [vmem:[%s4377 + $0x309] sm:$0xff]
  %v5146 = vld [vmem:[%s4377 + $0x319] sm:$0xff]
  %v5147 = vld [vmem:[%s4377 + $0x321] sm:$0xff]
  %v5148 = vld [vmem:[%s1 + $0x38] sm:$0xff]
  %v5150 = vsel %vm28, %v5084, 0
  %v5153 = vsel %vm28, %v5085, 0
  %v5156 = vsel %vm28, %v5086, 0
  %v5159 = vsel %vm28, %v5087, 0
  %v5162 = vsel %vm28, %v5088, 0
  %v5165 = vsel %vm28, %v5089, 0
  %v5168 = vsel %vm28, %v5090, 0
  %v5171 = vsel %vm28, %v5091, 0
  %v5174 = vsel %vm28, %v5092, 0
  %v5177 = vsel %vm28, %v5093, 0
  %v5180 = vsel %vm28, %v5094, 0
  %v5183 = vsel %vm28, %v5095, 0
  %v5186 = vsel %vm28, %v5096, 0
  %v5189 = vsel %vm28, %v5097, 0
  %v5192 = vsel %vm28, %v5098, 0
  %v5195 = vsel %vm28, %v5099, 0
  %v5198 = vsel %vm28, %v5100, 0
  %v5201 = vsel %vm28, %v5101, 0
  %v5204 = vsel %vm28, %v5102, 0
  %v5207 = vsel %vm28, %v5103, 0
  %v5210 = vsel %vm28, %v5104, 0
  %v5213 = vsel %vm28, %v5105, 0
  %v5216 = vsel %vm28, %v5106, 0
  %v5219 = vsel %vm28, %v5107, 0
  %v5222 = vsel %vm28, %v5108, 0
  %v5225 = vsel %vm28, %v5109, 0
  %v5228 = vsel %vm28, %v5110, 0
  %v5231 = vsel %vm28, %v5111, 0
  %v5234 = vsel %vm28, %v5112, 0
  %v5237 = vsel %vm28, %v5113, 0
  %v5240 = vsel %vm28, %v5114, 0
  %v5243 = vsel %vm28, %v5115, 0
  %v5246 = vsel %vm28, %v5116, 0
  %v5249 = vsel %vm28, %v5117, 0
  %v5252 = vsel %vm28, %v5118, 0
  %v5255 = vsel %vm28, %v5119, 0
  %v5258 = vsel %vm28, %v5120, 0
  %v5261 = vsel %vm28, %v5121, 0
  %v5264 = vsel %vm28, %v5122, 0
  %v5267 = vsel %vm28, %v5123, 0
  %v5270 = vsel %vm28, %v5124, 0
  %v5273 = vsel %vm28, %v5125, 0
  %v5276 = vsel %vm28, %v5126, 0
  %v5279 = vsel %vm28, %v5127, 0
  %v5282 = vsel %vm28, %v5128, 0
  %v5285 = vsel %vm28, %v5129, 0
  %v5288 = vsel %vm28, %v5130, 0
  %v5291 = vsel %vm28, %v5131, 0
  %v5294 = vsel %vm28, %v5132, 0
  %v5297 = vsel %vm28, %v5133, 0
  %v5300 = vsel %vm28, %v5134, 0
  %v5303 = vsel %vm28, %v5135, 0
  %v5306 = vsel %vm28, %v5136, 0
  %v5309 = vsel %vm28, %v5137, 0
  %v5312 = vsel %vm28, %v5138, 0
  %v5315 = vsel %vm28, %v5139, 0
  %v5318 = vsel %vm28, %v5140, 0
  %v5321 = vsel %vm28, %v5141, 0
  %v5324 = vsel %vm28, %v5142, 0
  %v5327 = vsel %vm28, %v5143, 0
  %v5330 = vsel %vm28, %v5144, 0
  %v5333 = vsel %vm28, %v5145, 0
  %v5336 = vsel %vm28, %v5146, 0
  %v5339 = vsel %vm28, %v5147, 0
  %5341 = vmatprep.subr.mxu0 0.0
  %5342 = vmatpush1.msra.mxu0 %v5148
  %5343 = vmatprep.subr.mxu0 0.0
  %5344 = vmatpush1.msra.mxu0 0.0
  %5345 = vmatprep.subr.mxu0 0.0
  %5346 = vmatpush1.msra.mxu0 0.0
  %5347 = vmatprep.subr.mxu0 0.0
  %5348 = vmatpush1.msra.mxu0 0.0
  %5349 = vmatprep.subr.mxu0 0.0
  %5350 = vmatpush1.msra.mxu0 0.0
  %5351 = vmatprep.subr.mxu0 0.0
  %5352 = vmatpush1.msra.mxu0 0.0
  %5353 = vmatprep.subr.mxu0 0.0
  %5354 = vmatpush1.msra.mxu0 0.0
  %5355 = vmatprep.subr.mxu0 0.0
  %5356 = vmatpush1.msra.mxu0 0.0
  %5357 = vmatprep.subr.mxu0 0.0
  %5358 = vmatpush1.msra.mxu0 0.0
  %5359 = vmatprep.subr.mxu0 0.0
  %5360 = vmatpush1.msra.mxu0 0.0
  %5361 = vmatprep.subr.mxu0 0.0
  %5362 = vmatpush1.msra.mxu0 0.0
  %5363 = vmatprep.subr.mxu0 0.0
  %5364 = vmatpush1.msra.mxu0 0.0
  %5365 = vmatprep.subr.mxu0 0.0
  %5366 = vmatpush1.msra.mxu0 0.0
  %5367 = vmatprep.subr.mxu0 0.0
  %5368 = vmatpush1.msra.mxu0 0.0
  %5369 = vmatprep.subr.mxu0 0.0
  %5370 = vmatpush1.msra.mxu0 0.0
  %5371 = vmatprep.subr.mxu0 0.0
  %5372 = vmatpush1.msra.mxu0 0.0
  %5373 = vmatprep.subr.mxu0 0.0
  %5374 = vmatpush1.msra.mxu0 0.0
  %5375 = vmatprep.subr.mxu0 0.0
  %5376 = vmatpush1.msra.mxu0 0.0
  %5377 = vmatprep.subr.mxu0 0.0
  %5378 = vmatpush1.msra.mxu0 0.0
  %5379 = vmatprep.subr.mxu0 0.0
  %5380 = vmatpush1.msra.mxu0 0.0
  %5381 = vmatprep.subr.mxu0 0.0
  %5382 = vmatpush1.msra.mxu0 0.0
  %5383 = vmatprep.subr.mxu0 0.0
  %5384 = vmatpush1.msra.mxu0 0.0
  %5385 = vmatprep.subr.mxu0 0.0
  %5386 = vmatpush1.msra.mxu0 0.0
  %5387 = vmatprep.subr.mxu0 0.0
  %5388 = vmatpush1.msra.mxu0 0.0
  %5389 = vmatprep.subr.mxu0 0.0
  %5390 = vmatpush1.msra.mxu0 0.0
  %5391 = vmatprep.subr.mxu0 0.0
  %5392 = vmatpush1.msra.mxu0 0.0
  %5393 = vmatprep.subr.mxu0 0.0
  %5394 = vmatpush1.msra.mxu0 0.0
  %5395 = vmatprep.subr.mxu0 0.0
  %5396 = vmatpush1.msra.mxu0 0.0
  %5397 = vmatprep.subr.mxu0 0.0
  %5398 = vmatpush1.msra.mxu0 0.0
  %5399 = vmatprep.subr.mxu0 0.0
  %5400 = vmatpush1.msra.mxu0 0.0
  %5401 = vmatprep.subr.mxu0 0.0
  %5402 = vmatpush1.msra.mxu0 0.0
  %5403 = vmatprep.subr.mxu0 0.0
  %5404 = vmatpush1.msra.mxu0 0.0
  %5405 = vmatprep.mubr.f32.mxu0 0.0
  %5406 = vmatmul.mubr.f32.gmra.mrb[0].mxu0 %v5150
  %v5407 = vpop.f32.mrb[0].mxu0
  %v5408 = vadd.f32 0.0, %v5407
  %v5409 = vpop.f32.mrb[0].mxu0
  %5410 = vmatprep.mubr.f32.mxu0 0.0
  %5411 = vmatmul.mubr.f32.gmra.mrb[0].mxu0 %v5153
  %v5412 = vpop.f32.mrb[0].mxu0
  %v5413 = vadd.f32 0.0, %v5412
  %v5414 = vpop.f32.mrb[0].mxu0
  %5415 = vmatprep.mubr.f32.mxu0 0.0
  %5416 = vmatmul.mubr.f32.gmra.mrb[0].mxu0 %v5156
  %v5417 = vpop.f32.mrb[0].mxu0
  %v5418 = vadd.f32 0.0, %v5417
  %v5419 = vpop.f32.mrb[0].mxu0
  %5420 = vmatprep.mubr.f32.mxu0 0.0
  %5421 = vmatmul.mubr.f32.gmra.mrb[0].mxu0 %v5159
  %v5422 = vpop.f32.mrb[0].mxu0
  %v5423 = vadd.f32 0.0, %v5422
  %v5424 = vpop.f32.mrb[0].mxu0
  %5425 = vmatprep.mubr.f32.mxu0 0.0
  %5426 = vmatmul.mubr.f32.gmra.mrb[0].mxu0 %v5162
  %v5427 = vpop.f32.mrb[0].mxu0
  %v5428 = vadd.f32 0.0, %v5427
  %v5429 = vpop.f32.mrb[0].mxu0
  %5430 = vmatprep.mubr.f32.mxu0 0.0
  %5431 = vmatmul.mubr.f32.gmra.mrb[0].mxu0 %v5165
  %v5432 = vpop.f32.mrb[0].mxu0
  %v5433 = vadd.f32 0.0, %v5432
  %v5434 = vpop.f32.mrb[0].mxu0
  %5435 = vmatprep.mubr.f32.mxu0 0.0
  %5436 = vmatmul.mubr.f32.gmra.mrb[0].mxu0 %v5168
  %v5437 = vpop.f32.mrb[0].mxu0
  %v5438 = vadd.f32 0.0, %v5437
  %v5439 = vpop.f32.mrb[0].mxu0
  %5440 = vmatprep.mubr.f32.mxu0 0.0
  %5441 = vmatmul.mubr.f32.gmra.mrb[0].mxu0 %v5171
  %v5442 = vpop.f32.mrb[0].mxu0
  %v5443 = vadd.f32 0.0, %v5442
  %v5444 = vpop.f32.mrb[0].mxu0
  %5445 = vmatprep.mubr.f32.mxu0 0.0
  %5446 = vmatmul.mubr.f32.gmra.mrb[0].mxu0 %v5174
  %v5447 = vpop.f32.mrb[0].mxu0
  %v5448 = vadd.f32 0.0, %v5447
  %v5449 = vpop.f32.mrb[0].mxu0
  %5450 = vmatprep.mubr.f32.mxu0 0.0
  %5451 = vmatmul.mubr.f32.gmra.mrb[0].mxu0 %v5177
  %v5452 = vpop.f32.mrb[0].mxu0
  %v5453 = vadd.f32 0.0, %v5452
  %v5454 = vpop.f32.mrb[0].mxu0
  %5455 = vmatprep.mubr.f32.mxu0 0.0
  %5456 = vmatmul.mubr.f32.gmra.mrb[0].mxu0 %v5180
  %v5457 = vpop.f32.mrb[0].mxu0
  %v5458 = vadd.f32 0.0, %v5457
  %v5459 = vpop.f32.mrb[0].mxu0
  %5460 = vmatprep.mubr.f32.mxu0 0.0
  %5461 = vmatmul.mubr.f32.gmra.mrb[0].mxu0 %v5183
  %v5462 = vpop.f32.mrb[0].mxu0
  %v5463 = vadd.f32 0.0, %v5462
  %v5464 = vpop.f32.mrb[0].mxu0
  %5465 = vmatprep.mubr.f32.mxu0 0.0
  %5466 = vmatmul.mubr.f32.gmra.mrb[0].mxu0 %v5186
  %v5467 = vpop.f32.mrb[0].mxu0
  %v5468 = vadd.f32 0.0, %v5467
  %v5469 = vpop.f32.mrb[0].mxu0
  %5470 = vmatprep.mubr.f32.mxu0 0.0
  %5471 = vmatmul.mubr.f32.gmra.mrb[0].mxu0 %v5189
  %v5472 = vpop.f32.mrb[0].mxu0
  %v5473 = vadd.f32 0.0, %v5472
  %v5474 = vpop.f32.mrb[0].mxu0
  %5475 = vmatprep.mubr.f32.mxu0 0.0
  %5476 = vmatmul.mubr.f32.gmra.mrb[0].mxu0 %v5192
  %v5477 = vpop.f32.mrb[0].mxu0
  %v5478 = vadd.f32 0.0, %v5477
  %v5479 = vpop.f32.mrb[0].mxu0
  %5480 = vmatprep.mubr.f32.mxu0 0.0
  %5481 = vmatmul.mubr.f32.gmra.mrb[0].mxu0 %v5195
  %v5482 = vpop.f32.mrb[0].mxu0
  %v5483 = vadd.f32 0.0, %v5482
  %v5484 = vpop.f32.mrb[0].mxu0
  %5485 = vmatprep.mubr.f32.mxu0 0.0
  %5486 = vmatmul.mubr.f32.gmra.mrb[0].mxu0 %v5198
  %v5487 = vpop.f32.mrb[0].mxu0
  %v5488 = vadd.f32 0.0, %v5487
  %v5489 = vpop.f32.mrb[0].mxu0
  %5490 = vmatprep.mubr.f32.mxu0 0.0
  %5491 = vmatmul.mubr.f32.gmra.mrb[0].mxu0 %v5201
  %v5492 = vpop.f32.mrb[0].mxu0
  %v5493 = vadd.f32 0.0, %v5492
  %v5494 = vpop.f32.mrb[0].mxu0
  %5495 = vmatprep.mubr.f32.mxu0 0.0
  %5496 = vmatmul.mubr.f32.gmra.mrb[0].mxu0 %v5204
  %v5497 = vpop.f32.mrb[0].mxu0
  %v5498 = vadd.f32 0.0, %v5497
  %v5499 = vpop.f32.mrb[0].mxu0
  %5500 = vmatprep.mubr.f32.mxu0 0.0
  %5501 = vmatmul.mubr.f32.gmra.mrb[0].mxu0 %v5207
  %v5502 = vpop.f32.mrb[0].mxu0
  %v5503 = vadd.f32 0.0, %v5502
  %v5504 = vpop.f32.mrb[0].mxu0
  %5505 = vmatprep.mubr.f32.mxu0 0.0
  %5506 = vmatmul.mubr.f32.gmra.mrb[0].mxu0 %v5210
  %v5507 = vpop.f32.mrb[0].mxu0
  %v5508 = vadd.f32 0.0, %v5507
  %v5509 = vpop.f32.mrb[0].mxu0
  %5510 = vmatprep.mubr.f32.mxu0 0.0
  %5511 = vmatmul.mubr.f32.gmra.mrb[0].mxu0 %v5213
  %v5512 = vpop.f32.mrb[0].mxu0
  %v5513 = vadd.f32 0.0, %v5512
  %v5514 = vpop.f32.mrb[0].mxu0
  %5515 = vmatprep.mubr.f32.mxu0 0.0
  %5516 = vmatmul.mubr.f32.gmra.mrb[0].mxu0 %v5216
  %v5517 = vpop.f32.mrb[0].mxu0
  %v5518 = vadd.f32 0.0, %v5517
  %v5519 = vpop.f32.mrb[0].mxu0
  %5520 = vmatprep.mubr.f32.mxu0 0.0
  %5521 = vmatmul.mubr.f32.gmra.mrb[0].mxu0 %v5219
  %v5522 = vpop.f32.mrb[0].mxu0
  %v5523 = vadd.f32 0.0, %v5522
  %v5524 = vpop.f32.mrb[0].mxu0
  %5525 = vmatprep.mubr.f32.mxu0 0.0
  %5526 = vmatmul.mubr.f32.gmra.mrb[0].mxu0 %v5222
  %v5527 = vpop.f32.mrb[0].mxu0
  %v5528 = vadd.f32 0.0, %v5527
  %v5529 = vpop.f32.mrb[0].mxu0
  %5530 = vmatprep.mubr.f32.mxu0 0.0
  %5531 = vmatmul.mubr.f32.gmra.mrb[0].mxu0 %v5225
  %v5532 = vpop.f32.mrb[0].mxu0
  %v5533 = vadd.f32 0.0, %v5532
  %v5534 = vpop.f32.mrb[0].mxu0
  %5535 = vmatprep.mubr.f32.mxu0 0.0
  %5536 = vmatmul.mubr.f32.gmra.mrb[0].mxu0 %v5228
  %v5537 = vpop.f32.mrb[0].mxu0
  %v5538 = vadd.f32 0.0, %v5537
  %v5539 = vpop.f32.mrb[0].mxu0
  %5540 = vmatprep.mubr.f32.mxu0 0.0
  %5541 = vmatmul.mubr.f32.gmra.mrb[0].mxu0 %v5231
  %v5542 = vpop.f32.mrb[0].mxu0
  %v5543 = vadd.f32 0.0, %v5542
  %v5544 = vpop.f32.mrb[0].mxu0
  %5545 = vmatprep.mubr.f32.mxu0 0.0
  %5546 = vmatmul.mubr.f32.gmra.mrb[0].mxu0 %v5234
  %v5547 = vpop.f32.mrb[0].mxu0
  %v5548 = vadd.f32 0.0, %v5547
  %v5549 = vpop.f32.mrb[0].mxu0
  %5550 = vmatprep.mubr.f32.mxu0 0.0
  %5551 = vmatmul.mubr.f32.gmra.mrb[0].mxu0 %v5237
  %v5552 = vpop.f32.mrb[0].mxu0
  %v5553 = vadd.f32 0.0, %v5552
  %v5554 = vpop.f32.mrb[0].mxu0
  %5555 = vmatprep.mubr.f32.mxu0 0.0
  %5556 = vmatmul.mubr.f32.gmra.mrb[0].mxu0 %v5240
  %v5557 = vpop.f32.mrb[0].mxu0
  %v5558 = vadd.f32 0.0, %v5557
  %v5559 = vpop.f32.mrb[0].mxu0
  %5560 = vmatprep.mubr.f32.mxu0 0.0
  %5561 = vmatmul.mubr.f32.gmra.mrb[0].mxu0 %v5243
  %v5562 = vpop.f32.mrb[0].mxu0
  %v5563 = vadd.f32 0.0, %v5562
  %v5564 = vpop.f32.mrb[0].mxu0
  %5565 = vmatprep.mubr.f32.mxu0 0.0
  %5566 = vmatmul.mubr.f32.gmra.mrb[0].mxu0 %v5246
  %v5567 = vpop.f32.mrb[0].mxu0
  %v5568 = vadd.f32 0.0, %v5567
  %v5569 = vpop.f32.mrb[0].mxu0
  %5570 = vmatprep.mubr.f32.mxu0 0.0
  %5571 = vmatmul.mubr.f32.gmra.mrb[0].mxu0 %v5249
  %v5572 = vpop.f32.mrb[0].mxu0
  %v5573 = vadd.f32 0.0, %v5572
  %v5574 = vpop.f32.mrb[0].mxu0
  %5575 = vmatprep.mubr.f32.mxu0 0.0
  %5576 = vmatmul.mubr.f32.gmra.mrb[0].mxu0 %v5252
  %v5577 = vpop.f32.mrb[0].mxu0
  %v5578 = vadd.f32 0.0, %v5577
  %v5579 = vpop.f32.mrb[0].mxu0
  %5580 = vmatprep.mubr.f32.mxu0 0.0
  %5581 = vmatmul.mubr.f32.gmra.mrb[0].mxu0 %v5255
  %v5582 = vpop.f32.mrb[0].mxu0
  %v5583 = vadd.f32 0.0, %v5582
  %v5584 = vpop.f32.mrb[0].mxu0
  %5585 = vmatprep.mubr.f32.mxu0 0.0
  %5586 = vmatmul.mubr.f32.gmra.mrb[0].mxu0 %v5258
  %v5587 = vpop.f32.mrb[0].mxu0
  %v5588 = vadd.f32 0.0, %v5587
  %v5589 = vpop.f32.mrb[0].mxu0
  %5590 = vmatprep.mubr.f32.mxu0 0.0
  %5591 = vmatmul.mubr.f32.gmra.mrb[0].mxu0 %v5261
  %v5592 = vpop.f32.mrb[0].mxu0
  %v5593 = vadd.f32 0.0, %v5592
  %v5594 = vpop.f32.mrb[0].mxu0
  %5595 = vmatprep.mubr.f32.mxu0 0.0
  %5596 = vmatmul.mubr.f32.gmra.mrb[0].mxu0 %v5264
  %v5597 = vpop.f32.mrb[0].mxu0
  %v5598 = vadd.f32 0.0, %v5597
  %v5599 = vpop.f32.mrb[0].mxu0
  %5600 = vmatprep.mubr.f32.mxu0 0.0
  %5601 = vmatmul.mubr.f32.gmra.mrb[0].mxu0 %v5267
  %v5602 = vpop.f32.mrb[0].mxu0
  %v5603 = vadd.f32 0.0, %v5602
  %v5604 = vpop.f32.mrb[0].mxu0
  %5605 = vmatprep.mubr.f32.mxu0 0.0
  %5606 = vmatmul.mubr.f32.gmra.mrb[0].mxu0 %v5270
  %v5607 = vpop.f32.mrb[0].mxu0
  %v5608 = vadd.f32 0.0, %v5607
  %v5609 = vpop.f32.mrb[0].mxu0
  %5610 = vmatprep.mubr.f32.mxu0 0.0
  %5611 = vmatmul.mubr.f32.gmra.mrb[0].mxu0 %v5273
  %v5612 = vpop.f32.mrb[0].mxu0
  %v5613 = vadd.f32 0.0, %v5612
  %v5614 = vpop.f32.mrb[0].mxu0
  %5615 = vmatprep.mubr.f32.mxu0 0.0
  %5616 = vmatmul.mubr.f32.gmra.mrb[0].mxu0 %v5276
  %v5617 = vpop.f32.mrb[0].mxu0
  %v5618 = vadd.f32 0.0, %v5617
  %v5619 = vpop.f32.mrb[0].mxu0
  %5620 = vmatprep.mubr.f32.mxu0 0.0
  %5621 = vmatmul.mubr.f32.gmra.mrb[0].mxu0 %v5279
  %v5622 = vpop.f32.mrb[0].mxu0
  %v5623 = vadd.f32 0.0, %v5622
  %v5624 = vpop.f32.mrb[0].mxu0
  %5625 = vmatprep.mubr.f32.mxu0 0.0
  %5626 = vmatmul.mubr.f32.gmra.mrb[0].mxu0 %v5282
  %v5627 = vpop.f32.mrb[0].mxu0
  %v5628 = vadd.f32 0.0, %v5627
  %v5629 = vpop.f32.mrb[0].mxu0
  %5630 = vmatprep.mubr.f32.mxu0 0.0
  %5631 = vmatmul.mubr.f32.gmra.mrb[0].mxu0 %v5285
  %v5632 = vpop.f32.mrb[0].mxu0
  %v5633 = vadd.f32 0.0, %v5632
  %v5634 = vpop.f32.mrb[0].mxu0
  %5635 = vmatprep.mubr.f32.mxu0 0.0
  %5636 = vmatmul.mubr.f32.gmra.mrb[0].mxu0 %v5288
  %v5637 = vpop.f32.mrb[0].mxu0
  %v5638 = vadd.f32 0.0, %v5637
  %v5639 = vpop.f32.mrb[0].mxu0
  %5640 = vmatprep.mubr.f32.mxu0 0.0
  %5641 = vmatmul.mubr.f32.gmra.mrb[0].mxu0 %v5291
  %v5642 = vpop.f32.mrb[0].mxu0
  %v5643 = vadd.f32 0.0, %v5642
  %v5644 = vpop.f32.mrb[0].mxu0
  %5645 = vmatprep.mubr.f32.mxu0 0.0
  %5646 = vmatmul.mubr.f32.gmra.mrb[0].mxu0 %v5294
  %v5647 = vpop.f32.mrb[0].mxu0
  %v5648 = vadd.f32 0.0, %v5647
  %v5649 = vpop.f32.mrb[0].mxu0
  %5650 = vmatprep.mubr.f32.mxu0 0.0
  %5651 = vmatmul.mubr.f32.gmra.mrb[0].mxu0 %v5297
  %v5652 = vpop.f32.mrb[0].mxu0
  %v5653 = vadd.f32 0.0, %v5652
  %v5654 = vpop.f32.mrb[0].mxu0
  %5655 = vmatprep.mubr.f32.mxu0 0.0
  %5656 = vmatmul.mubr.f32.gmra.mrb[0].mxu0 %v5300
  %v5657 = vpop.f32.mrb[0].mxu0
  %v5658 = vadd.f32 0.0, %v5657
  %v5659 = vpop.f32.mrb[0].mxu0
  %5660 = vmatprep.mubr.f32.mxu0 0.0
  %5661 = vmatmul.mubr.f32.gmra.mrb[0].mxu0 %v5303
  %v5662 = vpop.f32.mrb[0].mxu0
  %v5663 = vadd.f32 0.0, %v5662
  %v5664 = vpop.f32.mrb[0].mxu0
  %5665 = vmatprep.mubr.f32.mxu0 0.0
  %5666 = vmatmul.mubr.f32.gmra.mrb[0].mxu0 %v5306
  %v5667 = vpop.f32.mrb[0].mxu0
  %v5668 = vadd.f32 0.0, %v5667
  %v5669 = vpop.f32.mrb[0].mxu0
  %5670 = vmatprep.mubr.f32.mxu0 0.0
  %5671 = vmatmul.mubr.f32.gmra.mrb[0].mxu0 %v5309
  %v5672 = vpop.f32.mrb[0].mxu0
  %v5673 = vadd.f32 0.0, %v5672
  %v5674 = vpop.f32.mrb[0].mxu0
  %5675 = vmatprep.mubr.f32.mxu0 0.0
  %5676 = vmatmul.mubr.f32.gmra.mrb[0].mxu0 %v5312
  %v5677 = vpop.f32.mrb[0].mxu0
  %v5678 = vadd.f32 0.0, %v5677
  %v5679 = vpop.f32.mrb[0].mxu0
  %5680 = vmatprep.mubr.f32.mxu0 0.0
  %5681 = vmatmul.mubr.f32.gmra.mrb[0].mxu0 %v5315
  %v5682 = vpop.f32.mrb[0].mxu0
  %v5683 = vadd.f32 0.0, %v5682
  %v5684 = vpop.f32.mrb[0].mxu0
  %5685 = vmatprep.mubr.f32.mxu0 0.0
  %5686 = vmatmul.mubr.f32.gmra.mrb[0].mxu0 %v5318
  %v5687 = vpop.f32.mrb[0].mxu0
  %v5688 = vadd.f32 0.0, %v5687
  %v5689 = vpop.f32.mrb[0].mxu0
  %5690 = vmatprep.mubr.f32.mxu0 0.0
  %5691 = vmatmul.mubr.f32.gmra.mrb[0].mxu0 %v5321
  %v5692 = vpop.f32.mrb[0].mxu0
  %v5693 = vadd.f32 0.0, %v5692
  %v5694 = vpop.f32.mrb[0].mxu0
  %5695 = vmatprep.mubr.f32.mxu0 0.0
  %5696 = vmatmul.mubr.f32.gmra.mrb[0].mxu0 %v5324
  %v5697 = vpop.f32.mrb[0].mxu0
  %v5698 = vadd.f32 0.0, %v5697
  %v5699 = vpop.f32.mrb[0].mxu0
  %5700 = vmatprep.mubr.f32.mxu0 0.0
  %5701 = vmatmul.mubr.f32.gmra.mrb[0].mxu0 %v5327
  %v5702 = vpop.f32.mrb[0].mxu0
  %v5703 = vadd.f32 0.0, %v5702
  %v5704 = vpop.f32.mrb[0].mxu0
  %5705 = vmatprep.mubr.f32.mxu0 0.0
  %5706 = vmatmul.mubr.f32.gmra.mrb[0].mxu0 %v5330
  %v5707 = vpop.f32.mrb[0].mxu0
  %v5708 = vadd.f32 0.0, %v5707
  %v5709 = vpop.f32.mrb[0].mxu0
  %5710 = vmatprep.mubr.f32.mxu0 0.0
  %5711 = vmatmul.mubr.f32.gmra.mrb[0].mxu0 %v5333
  %v5712 = vpop.f32.mrb[0].mxu0
  %v5713 = vadd.f32 0.0, %v5712
  %v5714 = vpop.f32.mrb[0].mxu0
  %5715 = vmatprep.mubr.f32.mxu0 0.0
  %5716 = vmatmul.mubr.f32.gmra.mrb[0].mxu0 %v5336
  %v5717 = vpop.f32.mrb[0].mxu0
  %v5718 = vadd.f32 0.0, %v5717
  %v5719 = vpop.f32.mrb[0].mxu0
  %5720 = vmatprep.mubr.f32.mxu0 0.0
  %5721 = vmatmul.mubr.f32.gmra.mrb[0].mxu0 %v5339
  %v5722 = vpop.f32.mrb[0].mxu0
  %v5723 = vadd.f32 0.0, %v5722
  %v5724 = vpop.f32.mrb[0].mxu0
  %5725 = vdwg.mxu0
  %v5726 = vadd.f32 %v5020, %v5408
  %v5727 = vadd.f32 %v5021, %v5413
  %v5728 = vadd.f32 %v5022, %v5418
  %v5729 = vadd.f32 %v5023, %v5423
  %v5730 = vadd.f32 %v5024, %v5428
  %v5731 = vadd.f32 %v5025, %v5433
  %v5732 = vadd.f32 %v5026, %v5438
  %v5733 = vadd.f32 %v5027, %v5443
  %v5734 = vadd.f32 %v5028, %v5448
  %v5735 = vadd.f32 %v5029, %v5453
  %v5736 = vadd.f32 %v5030, %v5458
  %v5737 = vadd.f32 %v5031, %v5463
  %v5738 = vadd.f32 %v5032, %v5468
  %v5739 = vadd.f32 %v5033, %v5473
  %v5740 = vadd.f32 %v5034, %v5478
  %v5741 = vadd.f32 %v5035, %v5483
  %v5742 = vadd.f32 %v5036, %v5488
  %v5743 = vadd.f32 %v5037, %v5493
  %v5744 = vadd.f32 %v5038, %v5498
  %v5745 = vadd.f32 %v5039, %v5503
  %v5746 = vadd.f32 %v5040, %v5508
  %v5747 = vadd.f32 %v5041, %v5513
  %v5748 = vadd.f32 %v5042, %v5518
  %v5749 = vadd.f32 %v5043, %v5523
  %v5750 = vadd.f32 %v5044, %v5528
  %v5751 = vadd.f32 %v5045, %v5533
  %v5752 = vadd.f32 %v5046, %v5538
  %v5753 = vadd.f32 %v5047, %v5543
  %v5754 = vadd.f32 %v5048, %v5548
  %v5755 = vadd.f32 %v5049, %v5553
  %v5756 = vadd.f32 %v5050, %v5558
  %v5757 = vadd.f32 %v5051, %v5563
  %v5758 = vadd.f32 %v5052, %v5568
  %v5759 = vadd.f32 %v5053, %v5573
  %v5760 = vadd.f32 %v5054, %v5578
  %v5761 = vadd.f32 %v5055, %v5583
  %v5762 = vadd.f32 %v5056, %v5588
  %v5763 = vadd.f32 %v5057, %v5593
  %v5764 = vadd.f32 %v5058, %v5598
  %v5765 = vadd.f32 %v5059, %v5603
  %v5766 = vadd.f32 %v5060, %v5608
  %v5767 = vadd.f32 %v5061, %v5613
  %v5768 = vadd.f32 %v5062, %v5618
  %v5769 = vadd.f32 %v5063, %v5623
  %v5770 = vadd.f32 %v5064, %v5628
  %v5771 = vadd.f32 %v5065, %v5633
  %v5772 = vadd.f32 %v5066, %v5638
  %v5773 = vadd.f32 %v5067, %v5643
  %v5774 = vadd.f32 %v5068, %v5648
  %v5775 = vadd.f32 %v5069, %v5653
  %v5776 = vadd.f32 %v5070, %v5658
  %v5777 = vadd.f32 %v5071, %v5663
  %v5778 = vadd.f32 %v5072, %v5668
  %v5779 = vadd.f32 %v5073, %v5673
  %v5780 = vadd.f32 %v5074, %v5678
  %v5781 = vadd.f32 %v5075, %v5683
  %v5782 = vadd.f32 %v5076, %v5688
  %v5783 = vadd.f32 %v5077, %v5693
  %v5784 = vadd.f32 %v5078, %v5698
  %v5785 = vadd.f32 %v5079, %v5703
  %v5786 = vadd.f32 %v5080, %v5708
  %v5787 = vadd.f32 %v5081, %v5713
  %v5788 = vadd.f32 %v5082, %v5718
  %v5789 = vadd.f32 %v5083, %v5723
  %v5790 = vld [vmem:[%s4377 + $0x2] sm:$0xff]
  %v5791 = vld [vmem:[%s4377 + $0xa] sm:$0xff]
  %v5792 = vld [vmem:[%s4377 + $0x1a] sm:$0xff]
  %v5793 = vld [vmem:[%s4377 + $0x22] sm:$0xff]
  %v5794 = vld [vmem:[%s4377 + $0x32] sm:$0xff]
  %v5795 = vld [vmem:[%s4377 + $0x3a] sm:$0xff]
  %v5796 = vld [vmem:[%s4377 + $0x4a] sm:$0xff]
  %v5797 = vld [vmem:[%s4377 + $0x52] sm:$0xff]
  %v5798 = vld [vmem:[%s4377 + $0x62] sm:$0xff]
  %v5799 = vld [vmem:[%s4377 + $0x6a] sm:$0xff]
  %v5800 = vld [vmem:[%s4377 + $0x7a] sm:$0xff]
  %v5801 = vld [vmem:[%s4377 + $0x82] sm:$0xff]
  %v5802 = vld [vmem:[%s4377 + $0x92] sm:$0xff]
  %v5803 = vld [vmem:[%s4377 + $0x9a] sm:$0xff]
  %v5804 = vld [vmem:[%s4377 + $0xaa] sm:$0xff]
  %v5805 = vld [vmem:[%s4377 + $0xb2] sm:$0xff]
  %v5806 = vld [vmem:[%s4377 + $0xc2] sm:$0xff]
  %v5807 = vld [vmem:[%s4377 + $0xca] sm:$0xff]
  %v5808 = vld [vmem:[%s4377 + $0xda] sm:$0xff]
  %v5809 = vld [vmem:[%s4377 + $0xe2] sm:$0xff]
  %v5810 = vld [vmem:[%s4377 + $0xf2] sm:$0xff]
  %v5811 = vld [vmem:[%s4377 + $0xfa] sm:$0xff]
  %v5812 = vld [vmem:[%s4377 + $0x10a] sm:$0xff]
  %v5813 = vld [vmem:[%s4377 + $0x112] sm:$0xff]
  %v5814 = vld [vmem:[%s4377 + $0x122] sm:$0xff]
  %v5815 = vld [vmem:[%s4377 + $0x12a] sm:$0xff]
  %v5816 = vld [vmem:[%s4377 + $0x13a] sm:$0xff]
  %v5817 = vld [vmem:[%s4377 + $0x142] sm:$0xff]
  %v5818 = vld [vmem:[%s4377 + $0x152] sm:$0xff]
  %v5819 = vld [vmem:[%s4377 + $0x15a] sm:$0xff]
  %v5820 = vld [vmem:[%s4377 + $0x16a] sm:$0xff]
  %v5821 = vld [vmem:[%s4377 + $0x172] sm:$0xff]
  %v5822 = vld [vmem:[%s4377 + $0x1b2] sm:$0xff]
  %v5823 = vld [vmem:[%s4377 + $0x1ba] sm:$0xff]
  %v5824 = vld [vmem:[%s4377 + $0x1ca] sm:$0xff]
  %v5825 = vld [vmem:[%s4377 + $0x1d2] sm:$0xff]
  %v5826 = vld [vmem:[%s4377 + $0x1e2] sm:$0xff]
  %v5827 = vld [vmem:[%s4377 + $0x1ea] sm:$0xff]
  %v5828 = vld [vmem:[%s4377 + $0x1fa] sm:$0xff]
  %v5829 = vld [vmem:[%s4377 + $0x202] sm:$0xff]
  %v5830 = vld [vmem:[%s4377 + $0x212] sm:$0xff]
  %v5831 = vld [vmem:[%s4377 + $0x21a] sm:$0xff]
  %v5832 = vld [vmem:[%s4377 + $0x22a] sm:$0xff]
  %v5833 = vld [vmem:[%s4377 + $0x232] sm:$0xff]
  %v5834 = vld [vmem:[%s4377 + $0x242] sm:$0xff]
  %v5835 = vld [vmem:[%s4377 + $0x24a] sm:$0xff]
  %v5836 = vld [vmem:[%s4377 + $0x25a] sm:$0xff]
  %v5837 = vld [vmem:[%s4377 + $0x262] sm:$0xff]
  %v5838 = vld [vmem:[%s4377 + $0x272] sm:$0xff]
  %v5839 = vld [vmem:[%s4377 + $0x27a] sm:$0xff]
  %v5840 = vld [vmem:[%s4377 + $0x28a] sm:$0xff]
  %v5841 = vld [vmem:[%s4377 + $0x292] sm:$0xff]
  %v5842 = vld [vmem:[%s4377 + $0x2a2] sm:$0xff]
  %v5843 = vld [vmem:[%s4377 + $0x2aa] sm:$0xff]
  %v5844 = vld [vmem:[%s4377 + $0x2ba] sm:$0xff]
  %v5845 = vld [vmem:[%s4377 + $0x2c2] sm:$0xff]
  %v5846 = vld [vmem:[%s4377 + $0x2d2] sm:$0xff]
  %v5847 = vld [vmem:[%s4377 + $0x2da] sm:$0xff]
  %v5848 = vld [vmem:[%s4377 + $0x2ea] sm:$0xff]
  %v5849 = vld [vmem:[%s4377 + $0x2f2] sm:$0xff]
  %v5850 = vld [vmem:[%s4377 + $0x302] sm:$0xff]
  %v5851 = vld [vmem:[%s4377 + $0x30a] sm:$0xff]
  %v5852 = vld [vmem:[%s4377 + $0x31a] sm:$0xff]
  %v5853 = vld [vmem:[%s4377 + $0x322] sm:$0xff]
  %v5854 = vld [vmem:[%s1 + $0x40] sm:$0xff]
  %v5856 = vsel %vm28, %v5790, 0
  %v5859 = vsel %vm28, %v5791, 0
  %v5862 = vsel %vm28, %v5792, 0
  %v5865 = vsel %vm28, %v5793, 0
  %v5868 = vsel %vm28, %v5794, 0
  %v5871 = vsel %vm28, %v5795, 0
  %v5874 = vsel %vm28, %v5796, 0
  %v5877 = vsel %vm28, %v5797, 0
  %v5880 = vsel %vm28, %v5798, 0
  %v5883 = vsel %vm28, %v5799, 0
  %v5886 = vsel %vm28, %v5800, 0
  %v5889 = vsel %vm28, %v5801, 0
  %v5892 = vsel %vm28, %v5802, 0
  %v5895 = vsel %vm28, %v5803, 0
  %v5898 = vsel %vm28, %v5804, 0
  %v5901 = vsel %vm28, %v5805, 0
  %v5904 = vsel %vm28, %v5806, 0
  %v5907 = vsel %vm28, %v5807, 0
  %v5910 = vsel %vm28, %v5808, 0
  %v5913 = vsel %vm28, %v5809, 0
  %v5916 = vsel %vm28, %v5810, 0
  %v5919 = vsel %vm28, %v5811, 0
  %v5922 = vsel %vm28, %v5812, 0
  %v5925 = vsel %vm28, %v5813, 0
  %v5928 = vsel %vm28, %v5814, 0
  %v5931 = vsel %vm28, %v5815, 0
  %v5934 = vsel %vm28, %v5816, 0
  %v5937 = vsel %vm28, %v5817, 0
  %v5940 = vsel %vm28, %v5818, 0
  %v5943 = vsel %vm28, %v5819, 0
  %v5946 = vsel %vm28, %v5820, 0
  %v5949 = vsel %vm28, %v5821, 0
  %v5952 = vsel %vm28, %v5822, 0
  %v5955 = vsel %vm28, %v5823, 0
  %v5958 = vsel %vm28, %v5824, 0
  %v5961 = vsel %vm28, %v5825, 0
  %v5964 = vsel %vm28, %v5826, 0
  %v5967 = vsel %vm28, %v5827, 0
  %v5970 = vsel %vm28, %v5828, 0
  %v5973 = vsel %vm28, %v5829, 0
  %v5976 = vsel %vm28, %v5830, 0
  %v5979 = vsel %vm28, %v5831, 0
  %v5982 = vsel %vm28, %v5832, 0
  %v5985 = vsel %vm28, %v5833, 0
  %v5988 = vsel %vm28, %v5834, 0
  %v5991 = vsel %vm28, %v5835, 0
  %v5994 = vsel %vm28, %v5836, 0
  %v5997 = vsel %vm28, %v5837, 0
  %v6000 = vsel %vm28, %v5838, 0
  %v6003 = vsel %vm28, %v5839, 0
  %v6006 = vsel %vm28, %v5840, 0
  %v6009 = vsel %vm28, %v5841, 0
  %v6012 = vsel %vm28, %v5842, 0
  %v6015 = vsel %vm28, %v5843, 0
  %v6018 = vsel %vm28, %v5844, 0
  %v6021 = vsel %vm28, %v5845, 0
  %v6024 = vsel %vm28, %v5846, 0
  %v6027 = vsel %vm28, %v5847, 0
  %v6030 = vsel %vm28, %v5848, 0
  %v6033 = vsel %vm28, %v5849, 0
  %v6036 = vsel %vm28, %v5850, 0
  %v6039 = vsel %vm28, %v5851, 0
  %v6042 = vsel %vm28, %v5852, 0
  %v6045 = vsel %vm28, %v5853, 0
  %6047 = vmatprep.subr.mxu0 0.0
  %6048 = vmatpush1.msra.mxu0 %v5854
  %6049 = vmatprep.subr.mxu0 0.0
  %6050 = vmatpush1.msra.mxu0 0.0
  %6051 = vmatprep.subr.mxu0 0.0
  %6052 = vmatpush1.msra.mxu0 0.0
  %6053 = vmatprep.subr.mxu0 0.0
  %6054 = vmatpush1.msra.mxu0 0.0
  %6055 = vmatprep.subr.mxu0 0.0
  %6056 = vmatpush1.msra.mxu0 0.0
  %6057 = vmatprep.subr.mxu0 0.0
  %6058 = vmatpush1.msra.mxu0 0.0
  %6059 = vmatprep.subr.mxu0 0.0
  %6060 = vmatpush1.msra.mxu0 0.0
  %6061 = vmatprep.subr.mxu0 0.0
  %6062 = vmatpush1.msra.mxu0 0.0
  %6063 = vmatprep.subr.mxu0 0.0
  %6064 = vmatpush1.msra.mxu0 0.0
  %6065 = vmatprep.subr.mxu0 0.0
  %6066 = vmatpush1.msra.mxu0 0.0
  %6067 = vmatprep.subr.mxu0 0.0
  %6068 = vmatpush1.msra.mxu0 0.0
  %6069 = vmatprep.subr.mxu0 0.0
  %6070 = vmatpush1.msra.mxu0 0.0
  %6071 = vmatprep.subr.mxu0 0.0
  %6072 = vmatpush1.msra.mxu0 0.0
  %6073 = vmatprep.subr.mxu0 0.0
  %6074 = vmatpush1.msra.mxu0 0.0
  %6075 = vmatprep.subr.mxu0 0.0
  %6076 = vmatpush1.msra.mxu0 0.0
  %6077 = vmatprep.subr.mxu0 0.0
  %6078 = vmatpush1.msra.mxu0 0.0
  %6079 = vmatprep.subr.mxu0 0.0
  %6080 = vmatpush1.msra.mxu0 0.0
  %6081 = vmatprep.subr.mxu0 0.0
  %6082 = vmatpush1.msra.mxu0 0.0
  %6083 = vmatprep.subr.mxu0 0.0
  %6084 = vmatpush1.msra.mxu0 0.0
  %6085 = vmatprep.subr.mxu0 0.0
  %6086 = vmatpush1.msra.mxu0 0.0
  %6087 = vmatprep.subr.mxu0 0.0
  %6088 = vmatpush1.msra.mxu0 0.0
  %6089 = vmatprep.subr.mxu0 0.0
  %6090 = vmatpush1.msra.mxu0 0.0
  %6091 = vmatprep.subr.mxu0 0.0
  %6092 = vmatpush1.msra.mxu0 0.0
  %6093 = vmatprep.subr.mxu0 0.0
  %6094 = vmatpush1.msra.mxu0 0.0
  %6095 = vmatprep.subr.mxu0 0.0
  %6096 = vmatpush1.msra.mxu0 0.0
  %6097 = vmatprep.subr.mxu0 0.0
  %6098 = vmatpush1.msra.mxu0 0.0
  %6099 = vmatprep.subr.mxu0 0.0
  %6100 = vmatpush1.msra.mxu0 0.0
  %6101 = vmatprep.subr.mxu0 0.0
  %6102 = vmatpush1.msra.mxu0 0.0
  %6103 = vmatprep.subr.mxu0 0.0
  %6104 = vmatpush1.msra.mxu0 0.0
  %6105 = vmatprep.subr.mxu0 0.0
  %6106 = vmatpush1.msra.mxu0 0.0
  %6107 = vmatprep.subr.mxu0 0.0
  %6108 = vmatpush1.msra.mxu0 0.0
  %6109 = vmatprep.subr.mxu0 0.0
  %6110 = vmatpush1.msra.mxu0 0.0
  %6111 = vmatprep.mubr.f32.mxu0 0.0
  %6112 = vmatmul.mubr.f32.gmra.mrb[0].mxu0 %v5856
  %v6113 = vpop.f32.mrb[0].mxu0
  %v6114 = vadd.f32 0.0, %v6113
  %v6115 = vpop.f32.mrb[0].mxu0
  %6116 = vmatprep.mubr.f32.mxu0 0.0
  %6117 = vmatmul.mubr.f32.gmra.mrb[0].mxu0 %v5859
  %v6118 = vpop.f32.mrb[0].mxu0
  %v6119 = vadd.f32 0.0, %v6118
  %v6120 = vpop.f32.mrb[0].mxu0
  %6121 = vmatprep.mubr.f32.mxu0 0.0
  %6122 = vmatmul.mubr.f32.gmra.mrb[0].mxu0 %v5862
  %v6123 = vpop.f32.mrb[0].mxu0
  %v6124 = vadd.f32 0.0, %v6123
  %v6125 = vpop.f32.mrb[0].mxu0
  %6126 = vmatprep.mubr.f32.mxu0 0.0
  %6127 = vmatmul.mubr.f32.gmra.mrb[0].mxu0 %v5865
  %v6128 = vpop.f32.mrb[0].mxu0
  %v6129 = vadd.f32 0.0, %v6128
  %v6130 = vpop.f32.mrb[0].mxu0
  %6131 = vmatprep.mubr.f32.mxu0 0.0
  %6132 = vmatmul.mubr.f32.gmra.mrb[0].mxu0 %v5868
  %v6133 = vpop.f32.mrb[0].mxu0
  %v6134 = vadd.f32 0.0, %v6133
  %v6135 = vpop.f32.mrb[0].mxu0
  %6136 = vmatprep.mubr.f32.mxu0 0.0
  %6137 = vmatmul.mubr.f32.gmra.mrb[0].mxu0 %v5871
  %v6138 = vpop.f32.mrb[0].mxu0
  %v6139 = vadd.f32 0.0, %v6138
  %v6140 = vpop.f32.mrb[0].mxu0
  %6141 = vmatprep.mubr.f32.mxu0 0.0
  %6142 = vmatmul.mubr.f32.gmra.mrb[0].mxu0 %v5874
  %v6143 = vpop.f32.mrb[0].mxu0
  %v6144 = vadd.f32 0.0, %v6143
  %v6145 = vpop.f32.mrb[0].mxu0
  %6146 = vmatprep.mubr.f32.mxu0 0.0
  %6147 = vmatmul.mubr.f32.gmra.mrb[0].mxu0 %v5877
  %v6148 = vpop.f32.mrb[0].mxu0
  %v6149 = vadd.f32 0.0, %v6148
  %v6150 = vpop.f32.mrb[0].mxu0
  %6151 = vmatprep.mubr.f32.mxu0 0.0
  %6152 = vmatmul.mubr.f32.gmra.mrb[0].mxu0 %v5880
  %v6153 = vpop.f32.mrb[0].mxu0
  %v6154 = vadd.f32 0.0, %v6153
  %v6155 = vpop.f32.mrb[0].mxu0
  %6156 = vmatprep.mubr.f32.mxu0 0.0
  %6157 = vmatmul.mubr.f32.gmra.mrb[0].mxu0 %v5883
  %v6158 = vpop.f32.mrb[0].mxu0
  %v6159 = vadd.f32 0.0, %v6158
  %v6160 = vpop.f32.mrb[0].mxu0
  %6161 = vmatprep.mubr.f32.mxu0 0.0
  %6162 = vmatmul.mubr.f32.gmra.mrb[0].mxu0 %v5886
  %v6163 = vpop.f32.mrb[0].mxu0
  %v6164 = vadd.f32 0.0, %v6163
  %v6165 = vpop.f32.mrb[0].mxu0
  %6166 = vmatprep.mubr.f32.mxu0 0.0
  %6167 = vmatmul.mubr.f32.gmra.mrb[0].mxu0 %v5889
  %v6168 = vpop.f32.mrb[0].mxu0
  %v6169 = vadd.f32 0.0, %v6168
  %v6170 = vpop.f32.mrb[0].mxu0
  %6171 = vmatprep.mubr.f32.mxu0 0.0
  %6172 = vmatmul.mubr.f32.gmra.mrb[0].mxu0 %v5892
  %v6173 = vpop.f32.mrb[0].mxu0
  %v6174 = vadd.f32 0.0, %v6173
  %v6175 = vpop.f32.mrb[0].mxu0
  %6176 = vmatprep.mubr.f32.mxu0 0.0
  %6177 = vmatmul.mubr.f32.gmra.mrb[0].mxu0 %v5895
  %v6178 = vpop.f32.mrb[0].mxu0
  %v6179 = vadd.f32 0.0, %v6178
  %v6180 = vpop.f32.mrb[0].mxu0
  %6181 = vmatprep.mubr.f32.mxu0 0.0
  %6182 = vmatmul.mubr.f32.gmra.mrb[0].mxu0 %v5898
  %v6183 = vpop.f32.mrb[0].mxu0
  %v6184 = vadd.f32 0.0, %v6183
  %v6185 = vpop.f32.mrb[0].mxu0
  %6186 = vmatprep.mubr.f32.mxu0 0.0
  %6187 = vmatmul.mubr.f32.gmra.mrb[0].mxu0 %v5901
  %v6188 = vpop.f32.mrb[0].mxu0
  %v6189 = vadd.f32 0.0, %v6188
  %v6190 = vpop.f32.mrb[0].mxu0
  %6191 = vmatprep.mubr.f32.mxu0 0.0
  %6192 = vmatmul.mubr.f32.gmra.mrb[0].mxu0 %v5904
  %v6193 = vpop.f32.mrb[0].mxu0
  %v6194 = vadd.f32 0.0, %v6193
  %v6195 = vpop.f32.mrb[0].mxu0
  %6196 = vmatprep.mubr.f32.mxu0 0.0
  %6197 = vmatmul.mubr.f32.gmra.mrb[0].mxu0 %v5907
  %v6198 = vpop.f32.mrb[0].mxu0
  %v6199 = vadd.f32 0.0, %v6198
  %v6200 = vpop.f32.mrb[0].mxu0
  %6201 = vmatprep.mubr.f32.mxu0 0.0
  %6202 = vmatmul.mubr.f32.gmra.mrb[0].mxu0 %v5910
  %v6203 = vpop.f32.mrb[0].mxu0
  %v6204 = vadd.f32 0.0, %v6203
  %v6205 = vpop.f32.mrb[0].mxu0
  %6206 = vmatprep.mubr.f32.mxu0 0.0
  %6207 = vmatmul.mubr.f32.gmra.mrb[0].mxu0 %v5913
  %v6208 = vpop.f32.mrb[0].mxu0
  %v6209 = vadd.f32 0.0, %v6208
  %v6210 = vpop.f32.mrb[0].mxu0
  %6211 = vmatprep.mubr.f32.mxu0 0.0
  %6212 = vmatmul.mubr.f32.gmra.mrb[0].mxu0 %v5916
  %v6213 = vpop.f32.mrb[0].mxu0
  %v6214 = vadd.f32 0.0, %v6213
  %v6215 = vpop.f32.mrb[0].mxu0
  %6216 = vmatprep.mubr.f32.mxu0 0.0
  %6217 = vmatmul.mubr.f32.gmra.mrb[0].mxu0 %v5919
  %v6218 = vpop.f32.mrb[0].mxu0
  %v6219 = vadd.f32 0.0, %v6218
  %v6220 = vpop.f32.mrb[0].mxu0
  %6221 = vmatprep.mubr.f32.mxu0 0.0
  %6222 = vmatmul.mubr.f32.gmra.mrb[0].mxu0 %v5922
  %v6223 = vpop.f32.mrb[0].mxu0
  %v6224 = vadd.f32 0.0, %v6223
  %v6225 = vpop.f32.mrb[0].mxu0
  %6226 = vmatprep.mubr.f32.mxu0 0.0
  %6227 = vmatmul.mubr.f32.gmra.mrb[0].mxu0 %v5925
  %v6228 = vpop.f32.mrb[0].mxu0
  %v6229 = vadd.f32 0.0, %v6228
  %v6230 = vpop.f32.mrb[0].mxu0
  %6231 = vmatprep.mubr.f32.mxu0 0.0
  %6232 = vmatmul.mubr.f32.gmra.mrb[0].mxu0 %v5928
  %v6233 = vpop.f32.mrb[0].mxu0
  %v6234 = vadd.f32 0.0, %v6233
  %v6235 = vpop.f32.mrb[0].mxu0
  %6236 = vmatprep.mubr.f32.mxu0 0.0
  %6237 = vmatmul.mubr.f32.gmra.mrb[0].mxu0 %v5931
  %v6238 = vpop.f32.mrb[0].mxu0
  %v6239 = vadd.f32 0.0, %v6238
  %v6240 = vpop.f32.mrb[0].mxu0
  %6241 = vmatprep.mubr.f32.mxu0 0.0
  %6242 = vmatmul.mubr.f32.gmra.mrb[0].mxu0 %v5934
  %v6243 = vpop.f32.mrb[0].mxu0
  %v6244 = vadd.f32 0.0, %v6243
  %v6245 = vpop.f32.mrb[0].mxu0
  %6246 = vmatprep.mubr.f32.mxu0 0.0
  %6247 = vmatmul.mubr.f32.gmra.mrb[0].mxu0 %v5937
  %v6248 = vpop.f32.mrb[0].mxu0
  %v6249 = vadd.f32 0.0, %v6248
  %v6250 = vpop.f32.mrb[0].mxu0
  %6251 = vmatprep.mubr.f32.mxu0 0.0
  %6252 = vmatmul.mubr.f32.gmra.mrb[0].mxu0 %v5940
  %v6253 = vpop.f32.mrb[0].mxu0
  %v6254 = vadd.f32 0.0, %v6253
  %v6255 = vpop.f32.mrb[0].mxu0
  %6256 = vmatprep.mubr.f32.mxu0 0.0
  %6257 = vmatmul.mubr.f32.gmra.mrb[0].mxu0 %v5943
  %v6258 = vpop.f32.mrb[0].mxu0
  %v6259 = vadd.f32 0.0, %v6258
  %v6260 = vpop.f32.mrb[0].mxu0
  %6261 = vmatprep.mubr.f32.mxu0 0.0
  %6262 = vmatmul.mubr.f32.gmra.mrb[0].mxu0 %v5946
  %v6263 = vpop.f32.mrb[0].mxu0
  %v6264 = vadd.f32 0.0, %v6263
  %v6265 = vpop.f32.mrb[0].mxu0
  %6266 = vmatprep.mubr.f32.mxu0 0.0
  %6267 = vmatmul.mubr.f32.gmra.mrb[0].mxu0 %v5949
  %v6268 = vpop.f32.mrb[0].mxu0
  %v6269 = vadd.f32 0.0, %v6268
  %v6270 = vpop.f32.mrb[0].mxu0
  %6271 = vmatprep.mubr.f32.mxu0 0.0
  %6272 = vmatmul.mubr.f32.gmra.mrb[0].mxu0 %v5952
  %v6273 = vpop.f32.mrb[0].mxu0
  %v6274 = vadd.f32 0.0, %v6273
  %v6275 = vpop.f32.mrb[0].mxu0
  %6276 = vmatprep.mubr.f32.mxu0 0.0
  %6277 = vmatmul.mubr.f32.gmra.mrb[0].mxu0 %v5955
  %v6278 = vpop.f32.mrb[0].mxu0
  %v6279 = vadd.f32 0.0, %v6278
  %v6280 = vpop.f32.mrb[0].mxu0
  %6281 = vmatprep.mubr.f32.mxu0 0.0
  %6282 = vmatmul.mubr.f32.gmra.mrb[0].mxu0 %v5958
  %v6283 = vpop.f32.mrb[0].mxu0
  %v6284 = vadd.f32 0.0, %v6283
  %v6285 = vpop.f32.mrb[0].mxu0
  %6286 = vmatprep.mubr.f32.mxu0 0.0
  %6287 = vmatmul.mubr.f32.gmra.mrb[0].mxu0 %v5961
  %v6288 = vpop.f32.mrb[0].mxu0
  %v6289 = vadd.f32 0.0, %v6288
  %v6290 = vpop.f32.mrb[0].mxu0
  %6291 = vmatprep.mubr.f32.mxu0 0.0
  %6292 = vmatmul.mubr.f32.gmra.mrb[0].mxu0 %v5964
  %v6293 = vpop.f32.mrb[0].mxu0
  %v6294 = vadd.f32 0.0, %v6293
  %v6295 = vpop.f32.mrb[0].mxu0
  %6296 = vmatprep.mubr.f32.mxu0 0.0
  %6297 = vmatmul.mubr.f32.gmra.mrb[0].mxu0 %v5967
  %v6298 = vpop.f32.mrb[0].mxu0
  %v6299 = vadd.f32 0.0, %v6298
  %v6300 = vpop.f32.mrb[0].mxu0
  %6301 = vmatprep.mubr.f32.mxu0 0.0
  %6302 = vmatmul.mubr.f32.gmra.mrb[0].mxu0 %v5970
  %v6303 = vpop.f32.mrb[0].mxu0
  %v6304 = vadd.f32 0.0, %v6303
  %v6305 = vpop.f32.mrb[0].mxu0
  %6306 = vmatprep.mubr.f32.mxu0 0.0
  %6307 = vmatmul.mubr.f32.gmra.mrb[0].mxu0 %v5973
  %v6308 = vpop.f32.mrb[0].mxu0
  %v6309 = vadd.f32 0.0, %v6308
  %v6310 = vpop.f32.mrb[0].mxu0
  %6311 = vmatprep.mubr.f32.mxu0 0.0
  %6312 = vmatmul.mubr.f32.gmra.mrb[0].mxu0 %v5976
  %v6313 = vpop.f32.mrb[0].mxu0
  %v6314 = vadd.f32 0.0, %v6313
  %v6315 = vpop.f32.mrb[0].mxu0
  %6316 = vmatprep.mubr.f32.mxu0 0.0
  %6317 = vmatmul.mubr.f32.gmra.mrb[0].mxu0 %v5979
  %v6318 = vpop.f32.mrb[0].mxu0
  %v6319 = vadd.f32 0.0, %v6318
  %v6320 = vpop.f32.mrb[0].mxu0
  %6321 = vmatprep.mubr.f32.mxu0 0.0
  %6322 = vmatmul.mubr.f32.gmra.mrb[0].mxu0 %v5982
  %v6323 = vpop.f32.mrb[0].mxu0
  %v6324 = vadd.f32 0.0, %v6323
  %v6325 = vpop.f32.mrb[0].mxu0
  %6326 = vmatprep.mubr.f32.mxu0 0.0
  %6327 = vmatmul.mubr.f32.gmra.mrb[0].mxu0 %v5985
  %v6328 = vpop.f32.mrb[0].mxu0
  %v6329 = vadd.f32 0.0, %v6328
  %v6330 = vpop.f32.mrb[0].mxu0
  %6331 = vmatprep.mubr.f32.mxu0 0.0
  %6332 = vmatmul.mubr.f32.gmra.mrb[0].mxu0 %v5988
  %v6333 = vpop.f32.mrb[0].mxu0
  %v6334 = vadd.f32 0.0, %v6333
  %v6335 = vpop.f32.mrb[0].mxu0
  %6336 = vmatprep.mubr.f32.mxu0 0.0
  %6337 = vmatmul.mubr.f32.gmra.mrb[0].mxu0 %v5991
  %v6338 = vpop.f32.mrb[0].mxu0
  %v6339 = vadd.f32 0.0, %v6338
  %v6340 = vpop.f32.mrb[0].mxu0
  %6341 = vmatprep.mubr.f32.mxu0 0.0
  %6342 = vmatmul.mubr.f32.gmra.mrb[0].mxu0 %v5994
  %v6343 = vpop.f32.mrb[0].mxu0
  %v6344 = vadd.f32 0.0, %v6343
  %v6345 = vpop.f32.mrb[0].mxu0
  %6346 = vmatprep.mubr.f32.mxu0 0.0
  %6347 = vmatmul.mubr.f32.gmra.mrb[0].mxu0 %v5997
  %v6348 = vpop.f32.mrb[0].mxu0
  %v6349 = vadd.f32 0.0, %v6348
  %v6350 = vpop.f32.mrb[0].mxu0
  %6351 = vmatprep.mubr.f32.mxu0 0.0
  %6352 = vmatmul.mubr.f32.gmra.mrb[0].mxu0 %v6000
  %v6353 = vpop.f32.mrb[0].mxu0
  %v6354 = vadd.f32 0.0, %v6353
  %v6355 = vpop.f32.mrb[0].mxu0
  %6356 = vmatprep.mubr.f32.mxu0 0.0
  %6357 = vmatmul.mubr.f32.gmra.mrb[0].mxu0 %v6003
  %v6358 = vpop.f32.mrb[0].mxu0
  %v6359 = vadd.f32 0.0, %v6358
  %v6360 = vpop.f32.mrb[0].mxu0
  %6361 = vmatprep.mubr.f32.mxu0 0.0
  %6362 = vmatmul.mubr.f32.gmra.mrb[0].mxu0 %v6006
  %v6363 = vpop.f32.mrb[0].mxu0
  %v6364 = vadd.f32 0.0, %v6363
  %v6365 = vpop.f32.mrb[0].mxu0
  %6366 = vmatprep.mubr.f32.mxu0 0.0
  %6367 = vmatmul.mubr.f32.gmra.mrb[0].mxu0 %v6009
  %v6368 = vpop.f32.mrb[0].mxu0
  %v6369 = vadd.f32 0.0, %v6368
  %v6370 = vpop.f32.mrb[0].mxu0
  %6371 = vmatprep.mubr.f32.mxu0 0.0
  %6372 = vmatmul.mubr.f32.gmra.mrb[0].mxu0 %v6012
  %v6373 = vpop.f32.mrb[0].mxu0
  %v6374 = vadd.f32 0.0, %v6373
  %v6375 = vpop.f32.mrb[0].mxu0
  %6376 = vmatprep.mubr.f32.mxu0 0.0
  %6377 = vmatmul.mubr.f32.gmra.mrb[0].mxu0 %v6015
  %v6378 = vpop.f32.mrb[0].mxu0
  %v6379 = vadd.f32 0.0, %v6378
  %v6380 = vpop.f32.mrb[0].mxu0
  %6381 = vmatprep.mubr.f32.mxu0 0.0
  %6382 = vmatmul.mubr.f32.gmra.mrb[0].mxu0 %v6018
  %v6383 = vpop.f32.mrb[0].mxu0
  %v6384 = vadd.f32 0.0, %v6383
  %v6385 = vpop.f32.mrb[0].mxu0
  %6386 = vmatprep.mubr.f32.mxu0 0.0
  %6387 = vmatmul.mubr.f32.gmra.mrb[0].mxu0 %v6021
  %v6388 = vpop.f32.mrb[0].mxu0
  %v6389 = vadd.f32 0.0, %v6388
  %v6390 = vpop.f32.mrb[0].mxu0
  %6391 = vmatprep.mubr.f32.mxu0 0.0
  %6392 = vmatmul.mubr.f32.gmra.mrb[0].mxu0 %v6024
  %v6393 = vpop.f32.mrb[0].mxu0
  %v6394 = vadd.f32 0.0, %v6393
  %v6395 = vpop.f32.mrb[0].mxu0
  %6396 = vmatprep.mubr.f32.mxu0 0.0
  %6397 = vmatmul.mubr.f32.gmra.mrb[0].mxu0 %v6027
  %v6398 = vpop.f32.mrb[0].mxu0
  %v6399 = vadd.f32 0.0, %v6398
  %v6400 = vpop.f32.mrb[0].mxu0
  %6401 = vmatprep.mubr.f32.mxu0 0.0
  %6402 = vmatmul.mubr.f32.gmra.mrb[0].mxu0 %v6030
  %v6403 = vpop.f32.mrb[0].mxu0
  %v6404 = vadd.f32 0.0, %v6403
  %v6405 = vpop.f32.mrb[0].mxu0
  %6406 = vmatprep.mubr.f32.mxu0 0.0
  %6407 = vmatmul.mubr.f32.gmra.mrb[0].mxu0 %v6033
  %v6408 = vpop.f32.mrb[0].mxu0
  %v6409 = vadd.f32 0.0, %v6408
  %v6410 = vpop.f32.mrb[0].mxu0
  %6411 = vmatprep.mubr.f32.mxu0 0.0
  %6412 = vmatmul.mubr.f32.gmra.mrb[0].mxu0 %v6036
  %v6413 = vpop.f32.mrb[0].mxu0
  %v6414 = vadd.f32 0.0, %v6413
  %v6415 = vpop.f32.mrb[0].mxu0
  %6416 = vmatprep.mubr.f32.mxu0 0.0
  %6417 = vmatmul.mubr.f32.gmra.mrb[0].mxu0 %v6039
  %v6418 = vpop.f32.mrb[0].mxu0
  %v6419 = vadd.f32 0.0, %v6418
  %v6420 = vpop.f32.mrb[0].mxu0
  %6421 = vmatprep.mubr.f32.mxu0 0.0
  %6422 = vmatmul.mubr.f32.gmra.mrb[0].mxu0 %v6042
  %v6423 = vpop.f32.mrb[0].mxu0
  %v6424 = vadd.f32 0.0, %v6423
  %v6425 = vpop.f32.mrb[0].mxu0
  %6426 = vmatprep.mubr.f32.mxu0 0.0
  %6427 = vmatmul.mubr.f32.gmra.mrb[0].mxu0 %v6045
  %v6428 = vpop.f32.mrb[0].mxu0
  %v6429 = vadd.f32 0.0, %v6428
  %v6430 = vpop.f32.mrb[0].mxu0
  %6431 = vdwg.mxu0
  %v6432 = vadd.f32 %v5726, %v6114
  %v6433 = vadd.f32 %v5727, %v6119
  %v6434 = vadd.f32 %v5728, %v6124
  %v6435 = vadd.f32 %v5729, %v6129
  %v6436 = vadd.f32 %v5730, %v6134
  %v6437 = vadd.f32 %v5731, %v6139
  %v6438 = vadd.f32 %v5732, %v6144
  %v6439 = vadd.f32 %v5733, %v6149
  %v6440 = vadd.f32 %v5734, %v6154
  %v6441 = vadd.f32 %v5735, %v6159
  %v6442 = vadd.f32 %v5736, %v6164
  %v6443 = vadd.f32 %v5737, %v6169
  %v6444 = vadd.f32 %v5738, %v6174
  %v6445 = vadd.f32 %v5739, %v6179
  %v6446 = vadd.f32 %v5740, %v6184
  %v6447 = vadd.f32 %v5741, %v6189
  %v6448 = vadd.f32 %v5742, %v6194
  %v6449 = vadd.f32 %v5743, %v6199
  %v6450 = vadd.f32 %v5744, %v6204
  %v6451 = vadd.f32 %v5745, %v6209
  %v6452 = vadd.f32 %v5746, %v6214
  %v6453 = vadd.f32 %v5747, %v6219
  %v6454 = vadd.f32 %v5748, %v6224
  %v6455 = vadd.f32 %v5749, %v6229
  %v6456 = vadd.f32 %v5750, %v6234
  %v6457 = vadd.f32 %v5751, %v6239
  %v6458 = vadd.f32 %v5752, %v6244
  %v6459 = vadd.f32 %v5753, %v6249
  %v6460 = vadd.f32 %v5754, %v6254
  %v6461 = vadd.f32 %v5755, %v6259
  %v6462 = vadd.f32 %v5756, %v6264
  %v6463 = vadd.f32 %v5757, %v6269
  %v6464 = vadd.f32 %v5758, %v6274
  %v6465 = vadd.f32 %v5759, %v6279
  %v6466 = vadd.f32 %v5760, %v6284
  %v6467 = vadd.f32 %v5761, %v6289
  %v6468 = vadd.f32 %v5762, %v6294
  %v6469 = vadd.f32 %v5763, %v6299
  %v6470 = vadd.f32 %v5764, %v6304
  %v6471 = vadd.f32 %v5765, %v6309
  %v6472 = vadd.f32 %v5766, %v6314
  %v6473 = vadd.f32 %v5767, %v6319
  %v6474 = vadd.f32 %v5768, %v6324
  %v6475 = vadd.f32 %v5769, %v6329
  %v6476 = vadd.f32 %v5770, %v6334
  %v6477 = vadd.f32 %v5771, %v6339
  %v6478 = vadd.f32 %v5772, %v6344
  %v6479 = vadd.f32 %v5773, %v6349
  %v6480 = vadd.f32 %v5774, %v6354
  %v6481 = vadd.f32 %v5775, %v6359
  %v6482 = vadd.f32 %v5776, %v6364
  %v6483 = vadd.f32 %v5777, %v6369
  %v6484 = vadd.f32 %v5778, %v6374
  %v6485 = vadd.f32 %v5779, %v6379
  %v6486 = vadd.f32 %v5780, %v6384
  %v6487 = vadd.f32 %v5781, %v6389
  %v6488 = vadd.f32 %v5782, %v6394
  %v6489 = vadd.f32 %v5783, %v6399
  %v6490 = vadd.f32 %v5784, %v6404
  %v6491 = vadd.f32 %v5785, %v6409
  %v6492 = vadd.f32 %v5786, %v6414
  %v6493 = vadd.f32 %v5787, %v6419
  %v6494 = vadd.f32 %v5788, %v6424
  %v6495 = vadd.f32 %v5789, %v6429
  %v6496 = vadd.f32 %v6432, %v6433
  %v6497 = vadd.f32 %v6496, %v6434
  %v6498 = vadd.f32 %v6497, %v6435
  %v6499 = vadd.f32 %v6498, %v6436
  %v6500 = vadd.f32 %v6499, %v6437
  %v6501 = vadd.f32 %v6500, %v6438
  %v6502 = vadd.f32 %v6501, %v6439
  %v6503 = vadd.f32 %v6502, %v6440
  %v6504 = vadd.f32 %v6503, %v6441
  %v6505 = vadd.f32 %v6504, %v6442
  %v6506 = vadd.f32 %v6505, %v6443
  %v6507 = vadd.f32 %v6506, %v6444
  %v6508 = vadd.f32 %v6507, %v6445
  %v6509 = vadd.f32 %v6508, %v6446
  %v6510 = vadd.f32 %v6509, %v6447
  %v6511 = vadd.f32 %v6510, %v6448
  %v6512 = vadd.f32 %v6511, %v6449
  %v6513 = vadd.f32 %v6512, %v6450
  %v6514 = vadd.f32 %v6513, %v6451
  %v6515 = vadd.f32 %v6514, %v6452
  %v6516 = vadd.f32 %v6515, %v6453
  %v6517 = vadd.f32 %v6516, %v6454
  %v6518 = vadd.f32 %v6517, %v6455
  %v6519 = vadd.f32 %v6518, %v6456
  %v6520 = vadd.f32 %v6519, %v6457
  %v6521 = vadd.f32 %v6520, %v6458
  %v6522 = vadd.f32 %v6521, %v6459
  %v6523 = vadd.f32 %v6522, %v6460
  %v6524 = vadd.f32 %v6523, %v6461
  %v6525 = vadd.f32 %v6524, %v6462
  %v6526 = vadd.f32 %v6525, %v6463
  %v6527 = vadd.f32 %v6526, %v6464
  %v6528 = vadd.f32 %v6527, %v6465
  %v6529 = vadd.f32 %v6528, %v6466
  %v6530 = vadd.f32 %v6529, %v6467
  %v6531 = vadd.f32 %v6530, %v6468
  %v6532 = vadd.f32 %v6531, %v6469
  %v6533 = vadd.f32 %v6532, %v6470
  %v6534 = vadd.f32 %v6533, %v6471
  %v6535 = vadd.f32 %v6534, %v6472
  %v6536 = vadd.f32 %v6535, %v6473
  %v6537 = vadd.f32 %v6536, %v6474
  %v6538 = vadd.f32 %v6537, %v6475
  %v6539 = vadd.f32 %v6538, %v6476
  %v6540 = vadd.f32 %v6539, %v6477
  %v6541 = vadd.f32 %v6540, %v6478
  %v6542 = vadd.f32 %v6541, %v6479
  %v6543 = vadd.f32 %v6542, %v6480
  %v6544 = vadd.f32 %v6543, %v6481
  %v6545 = vadd.f32 %v6544, %v6482
  %v6546 = vadd.f32 %v6545, %v6483
  %v6547 = vadd.f32 %v6546, %v6484
  %v6548 = vadd.f32 %v6547, %v6485
  %v6549 = vadd.f32 %v6548, %v6486
  %v6550 = vadd.f32 %v6549, %v6487
  %v6551 = vadd.f32 %v6550, %v6488
  %v6552 = vadd.f32 %v6551, %v6489
  %v6553 = vadd.f32 %v6552, %v6490
  %v6554 = vadd.f32 %v6553, %v6491
  %v6555 = vadd.f32 %v6554, %v6492
  %v6556 = vadd.f32 %v6555, %v6493
  %v6557 = vadd.f32 %v6556, %v6494
  %v6558 = vadd.f32 %v6557, %v6495
  %v6559 = vrot.slane %v6558, 4
  %v6560 = vadd.f32 %v6558, %v6559
  %v6561 = vrot.slane %v6560, 2
  %v6562 = vadd.f32 %v6560, %v6561
  %v6563 = vrot.slane %v6562, 1
  %v6564 = vadd.f32 %v6562, %v6563
  %v6565 = vmul.f32 %v6432, %v6432
  %v6566 = vmul.f32 %v6433, %v6433
  %v6567 = vmul.f32 %v6434, %v6434
  %v6568 = vmul.f32 %v6435, %v6435
  %v6569 = vmul.f32 %v6436, %v6436
  %v6570 = vmul.f32 %v6437, %v6437
  %v6571 = vmul.f32 %v6438, %v6438
  %v6572 = vmul.f32 %v6439, %v6439
  %v6573 = vmul.f32 %v6440, %v6440
  %v6574 = vmul.f32 %v6441, %v6441
  %v6575 = vmul.f32 %v6442, %v6442
  %v6576 = vmul.f32 %v6443, %v6443
  %v6577 = vmul.f32 %v6444, %v6444
  %v6578 = vmul.f32 %v6445, %v6445
  %v6579 = vmul.f32 %v6446, %v6446
  %v6580 = vmul.f32 %v6447, %v6447
  %v6581 = vmul.f32 %v6448, %v6448
  %v6582 = vmul.f32 %v6449, %v6449
  %v6583 = vmul.f32 %v6450, %v6450
  %v6584 = vmul.f32 %v6451, %v6451
  %v6585 = vmul.f32 %v6452, %v6452
  %v6586 = vmul.f32 %v6453, %v6453
  %v6587 = vmul.f32 %v6454, %v6454
  %v6588 = vmul.f32 %v6455, %v6455
  %v6589 = vmul.f32 %v6456, %v6456
  %v6590 = vmul.f32 %v6457, %v6457
  %v6591 = vmul.f32 %v6458, %v6458
  %v6592 = vmul.f32 %v6459, %v6459
  %v6593 = vmul.f32 %v6460, %v6460
  %v6594 = vmul.f32 %v6461, %v6461
  %v6595 = vmul.f32 %v6462, %v6462
  %v6596 = vmul.f32 %v6463, %v6463
  %v6597 = vmul.f32 %v6464, %v6464
  %v6598 = vmul.f32 %v6465, %v6465
  %v6599 = vmul.f32 %v6466, %v6466
  %v6600 = vmul.f32 %v6467, %v6467
  %v6601 = vmul.f32 %v6468, %v6468
  %v6602 = vmul.f32 %v6469, %v6469
  %v6603 = vmul.f32 %v6470, %v6470
  %v6604 = vmul.f32 %v6471, %v6471
  %v6605 = vmul.f32 %v6472, %v6472
  %v6606 = vmul.f32 %v6473, %v6473
  %v6607 = vmul.f32 %v6474, %v6474
  %v6608 = vmul.f32 %v6475, %v6475
  %v6609 = vmul.f32 %v6476, %v6476
  %v6610 = vmul.f32 %v6477, %v6477
  %v6611 = vmul.f32 %v6478, %v6478
  %v6612 = vmul.f32 %v6479, %v6479
  %v6613 = vmul.f32 %v6480, %v6480
  %v6614 = vmul.f32 %v6481, %v6481
  %v6615 = vmul.f32 %v6482, %v6482
  %v6616 = vmul.f32 %v6483, %v6483
  %v6617 = vmul.f32 %v6484, %v6484
  %v6618 = vmul.f32 %v6485, %v6485
  %v6619 = vmul.f32 %v6486, %v6486
  %v6620 = vmul.f32 %v6487, %v6487
  %v6621 = vmul.f32 %v6488, %v6488
  %v6622 = vmul.f32 %v6489, %v6489
  %v6623 = vmul.f32 %v6490, %v6490
  %v6624 = vmul.f32 %v6491, %v6491
  %v6625 = vmul.f32 %v6492, %v6492
  %v6626 = vmul.f32 %v6493, %v6493
  %v6627 = vmul.f32 %v6494, %v6494
  %v6628 = vmul.f32 %v6495, %v6495
  %v6629 = vadd.f32 %v6565, %v6566
  %v6630 = vadd.f32 %v6629, %v6567
  %v6631 = vadd.f32 %v6630, %v6568
  %v6632 = vadd.f32 %v6631, %v6569
  %v6633 = vadd.f32 %v6632, %v6570
  %v6634 = vadd.f32 %v6633, %v6571
  %v6635 = vadd.f32 %v6634, %v6572
  %v6636 = vadd.f32 %v6635, %v6573
  %v6637 = vadd.f32 %v6636, %v6574
  %v6638 = vadd.f32 %v6637, %v6575
  %v6639 = vadd.f32 %v6638, %v6576
  %v6640 = vadd.f32 %v6639, %v6577
  %v6641 = vadd.f32 %v6640, %v6578
  %v6642 = vadd.f32 %v6641, %v6579
  %v6643 = vadd.f32 %v6642, %v6580
  %v6644 = vadd.f32 %v6643, %v6581
  %v6645 = vadd.f32 %v6644, %v6582
  %v6646 = vadd.f32 %v6645, %v6583
  %v6647 = vadd.f32 %v6646, %v6584
  %v6648 = vadd.f32 %v6647, %v6585
  %v6649 = vadd.f32 %v6648, %v6586
  %v6650 = vadd.f32 %v6649, %v6587
  %v6651 = vadd.f32 %v6650, %v6588
  %v6652 = vadd.f32 %v6651, %v6589
  %v6653 = vadd.f32 %v6652, %v6590
  %v6654 = vadd.f32 %v6653, %v6591
  %v6655 = vadd.f32 %v6654, %v6592
  %v6656 = vadd.f32 %v6655, %v6593
  %v6657 = vadd.f32 %v6656, %v6594
  %v6658 = vadd.f32 %v6657, %v6595
  %v6659 = vadd.f32 %v6658, %v6596
  %v6660 = vadd.f32 %v6659, %v6597
  %v6661 = vadd.f32 %v6660, %v6598
  %v6662 = vadd.f32 %v6661, %v6599
  %v6663 = vadd.f32 %v6662, %v6600
  %v6664 = vadd.f32 %v6663, %v6601
  %v6665 = vadd.f32 %v6664, %v6602
  %v6666 = vadd.f32 %v6665, %v6603
  %v6667 = vadd.f32 %v6666, %v6604
  %v6668 = vadd.f32 %v6667, %v6605
  %v6669 = vadd.f32 %v6668, %v6606
  %v6670 = vadd.f32 %v6669, %v6607
  %v6671 = vadd.f32 %v6670, %v6608
  %v6672 = vadd.f32 %v6671, %v6609
  %v6673 = vadd.f32 %v6672, %v6610
  %v6674 = vadd.f32 %v6673, %v6611
  %v6675 = vadd.f32 %v6674, %v6612
  %v6676 = vadd.f32 %v6675, %v6613
  %v6677 = vadd.f32 %v6676, %v6614
  %v6678 = vadd.f32 %v6677, %v6615
  %v6679 = vadd.f32 %v6678, %v6616
  %v6680 = vadd.f32 %v6679, %v6617
  %v6681 = vadd.f32 %v6680, %v6618
  %v6682 = vadd.f32 %v6681, %v6619
  %v6683 = vadd.f32 %v6682, %v6620
  %v6684 = vadd.f32 %v6683, %v6621
  %v6685 = vadd.f32 %v6684, %v6622
  %v6686 = vadd.f32 %v6685, %v6623
  %v6687 = vadd.f32 %v6686, %v6624
  %v6688 = vadd.f32 %v6687, %v6625
  %v6689 = vadd.f32 %v6688, %v6626
  %v6690 = vadd.f32 %v6689, %v6627
  %v6691 = vadd.f32 %v6690, %v6628
  %v6692 = vrot.slane %v6691, 4
  %v6693 = vadd.f32 %v6691, %v6692
  %v6694 = vrot.slane %v6693, 2
  %v6695 = vadd.f32 %v6693, %v6694
  %v6696 = vrot.slane %v6695, 1
  %v6697 = vadd.f32 %v6695, %v6696
  %v6698 = vmul.f32 %v6564, 0.001953125
  %v6699 = vmul.f32 %v6697, 0.001953125
  %v6700 = vmul.f32 %v6698, %v6698
  %v6701 = vsub.f32 %v6699, %v6700
  %v6702 = vmax.f32 %v6701, 0.0
  %v6703 = vadd.f32 %v6702, 1e-05
  %v6704 = vrsqrt.pop %v6703
  %v6705 = vmul.f32 %v6704, %v267
  %v6706 = vmul.f32 %v6698, %v6705
  %v6707 = vsub.f32 %v268, %v6706
  %v6708 = vlaneseq
  %v6709 = vshrl.u32 %v6708, 7
  %v6710 = vsub.s32 0, %v6709
  %v6711 = vrot.slane %v6705, %v6710
  %v6712 = vmul.f32 %v6432, %v6711
  %v6713 = vmul.f32 %v6433, %v6711
  %v6714 = vmul.f32 %v6434, %v6711
  %v6715 = vmul.f32 %v6435, %v6711
  %v6716 = vmul.f32 %v6436, %v6711
  %v6717 = vmul.f32 %v6437, %v6711
  %v6718 = vmul.f32 %v6438, %v6711
  %v6719 = vmul.f32 %v6439, %v6711
  %v6720 = vmul.f32 %v6440, %v6711
  %v6721 = vmul.f32 %v6441, %v6711
  %v6722 = vmul.f32 %v6442, %v6711
  %v6723 = vmul.f32 %v6443, %v6711
  %v6724 = vmul.f32 %v6444, %v6711
  %v6725 = vmul.f32 %v6445, %v6711
  %v6726 = vmul.f32 %v6446, %v6711
  %v6727 = vmul.f32 %v6447, %v6711
  %v6728 = vmul.f32 %v6448, %v6711
  %v6729 = vmul.f32 %v6449, %v6711
  %v6730 = vmul.f32 %v6450, %v6711
  %v6731 = vmul.f32 %v6451, %v6711
  %v6732 = vmul.f32 %v6452, %v6711
  %v6733 = vmul.f32 %v6453, %v6711
  %v6734 = vmul.f32 %v6454, %v6711
  %v6735 = vmul.f32 %v6455, %v6711
  %v6736 = vmul.f32 %v6456, %v6711
  %v6737 = vmul.f32 %v6457, %v6711
  %v6738 = vmul.f32 %v6458, %v6711
  %v6739 = vmul.f32 %v6459, %v6711
  %v6740 = vmul.f32 %v6460, %v6711
  %v6741 = vmul.f32 %v6461, %v6711
  %v6742 = vmul.f32 %v6462, %v6711
  %v6743 = vmul.f32 %v6463, %v6711
  %v6744 = vmul.f32 %v6464, %v6711
  %v6745 = vmul.f32 %v6465, %v6711
  %v6746 = vmul.f32 %v6466, %v6711
  %v6747 = vmul.f32 %v6467, %v6711
  %v6748 = vmul.f32 %v6468, %v6711
  %v6749 = vmul.f32 %v6469, %v6711
  %v6750 = vmul.f32 %v6470, %v6711
  %v6751 = vmul.f32 %v6471, %v6711
  %v6752 = vmul.f32 %v6472, %v6711
  %v6753 = vmul.f32 %v6473, %v6711
  %v6754 = vmul.f32 %v6474, %v6711
  %v6755 = vmul.f32 %v6475, %v6711
  %v6756 = vmul.f32 %v6476, %v6711
  %v6757 = vmul.f32 %v6477, %v6711
  %v6758 = vmul.f32 %v6478, %v6711
  %v6759 = vmul.f32 %v6479, %v6711
  %v6760 = vmul.f32 %v6480, %v6711
  %v6761 = vmul.f32 %v6481, %v6711
  %v6762 = vmul.f32 %v6482, %v6711
  %v6763 = vmul.f32 %v6483, %v6711
  %v6764 = vmul.f32 %v6484, %v6711
  %v6765 = vmul.f32 %v6485, %v6711
  %v6766 = vmul.f32 %v6486, %v6711
  %v6767 = vmul.f32 %v6487, %v6711
  %v6768 = vmul.f32 %v6488, %v6711
  %v6769 = vmul.f32 %v6489, %v6711
  %v6770 = vmul.f32 %v6490, %v6711
  %v6771 = vmul.f32 %v6491, %v6711
  %v6772 = vmul.f32 %v6492, %v6711
  %v6773 = vmul.f32 %v6493, %v6711
  %v6774 = vmul.f32 %v6494, %v6711
  %v6775 = vmul.f32 %v6495, %v6711
  %v6777 = vlaneseq
  %v6778 = vshrl.u32 %v6777, 7
  %v6779 = vsub.s32 0, %v6778
  %v6780 = vrot.slane %v6707, %v6779
  %v6782 = vadd.f32 %v6712, %v6780
  %v6783 = vadd.f32 %v6713, %v6780
  %v6784 = vadd.f32 %v6714, %v6780
  %v6785 = vadd.f32 %v6715, %v6780
  %v6786 = vadd.f32 %v6716, %v6780
  %v6787 = vadd.f32 %v6717, %v6780
  %v6788 = vadd.f32 %v6718, %v6780
  %v6789 = vadd.f32 %v6719, %v6780
  %v6790 = vadd.f32 %v6720, %v6780
  %v6791 = vadd.f32 %v6721, %v6780
  %v6792 = vadd.f32 %v6722, %v6780
  %v6793 = vadd.f32 %v6723, %v6780
  %v6794 = vadd.f32 %v6724, %v6780
  %v6795 = vadd.f32 %v6725, %v6780
  %v6796 = vadd.f32 %v6726, %v6780
  %v6797 = vadd.f32 %v6727, %v6780
  %v6798 = vadd.f32 %v6728, %v6780
  %v6799 = vadd.f32 %v6729, %v6780
  %v6800 = vadd.f32 %v6730, %v6780
  %v6801 = vadd.f32 %v6731, %v6780
  %v6802 = vadd.f32 %v6732, %v6780
  %v6803 = vadd.f32 %v6733, %v6780
  %v6804 = vadd.f32 %v6734, %v6780
  %v6805 = vadd.f32 %v6735, %v6780
  %v6806 = vadd.f32 %v6736, %v6780
  %v6807 = vadd.f32 %v6737, %v6780
  %v6808 = vadd.f32 %v6738, %v6780
  %v6809 = vadd.f32 %v6739, %v6780
  %v6810 = vadd.f32 %v6740, %v6780
  %v6811 = vadd.f32 %v6741, %v6780
  %v6812 = vadd.f32 %v6742, %v6780
  %v6813 = vadd.f32 %v6743, %v6780
  %v6814 = vadd.f32 %v6744, %v6780
  %v6815 = vadd.f32 %v6745, %v6780
  %v6816 = vadd.f32 %v6746, %v6780
  %v6817 = vadd.f32 %v6747, %v6780
  %v6818 = vadd.f32 %v6748, %v6780
  %v6819 = vadd.f32 %v6749, %v6780
  %v6820 = vadd.f32 %v6750, %v6780
  %v6821 = vadd.f32 %v6751, %v6780
  %v6822 = vadd.f32 %v6752, %v6780
  %v6823 = vadd.f32 %v6753, %v6780
  %v6824 = vadd.f32 %v6754, %v6780
  %v6825 = vadd.f32 %v6755, %v6780
  %v6826 = vadd.f32 %v6756, %v6780
  %v6827 = vadd.f32 %v6757, %v6780
  %v6828 = vadd.f32 %v6758, %v6780
  %v6829 = vadd.f32 %v6759, %v6780
  %v6830 = vadd.f32 %v6760, %v6780
  %v6831 = vadd.f32 %v6761, %v6780
  %v6832 = vadd.f32 %v6762, %v6780
  %v6833 = vadd.f32 %v6763, %v6780
  %v6834 = vadd.f32 %v6764, %v6780
  %v6835 = vadd.f32 %v6765, %v6780
  %v6836 = vadd.f32 %v6766, %v6780
  %v6837 = vadd.f32 %v6767, %v6780
  %v6838 = vadd.f32 %v6768, %v6780
  %v6839 = vadd.f32 %v6769, %v6780
  %v6840 = vadd.f32 %v6770, %v6780
  %v6841 = vadd.f32 %v6771, %v6780
  %v6842 = vadd.f32 %v6772, %v6780
  %v6843 = vadd.f32 %v6773, %v6780
  %v6844 = vadd.f32 %v6774, %v6780
  %v6845 = vadd.f32 %v6775, %v6780
  %v6846 = vmax.f32 %v6782, 0.0
  %v6847 = vmax.f32 %v6783, 0.0
  %v6848 = vmax.f32 %v6784, 0.0
  %v6849 = vmax.f32 %v6785, 0.0
  %v6850 = vmax.f32 %v6786, 0.0
  %v6851 = vmax.f32 %v6787, 0.0
  %v6852 = vmax.f32 %v6788, 0.0
  %v6853 = vmax.f32 %v6789, 0.0
  %v6854 = vmax.f32 %v6790, 0.0
  %v6855 = vmax.f32 %v6791, 0.0
  %v6856 = vmax.f32 %v6792, 0.0
  %v6857 = vmax.f32 %v6793, 0.0
  %v6858 = vmax.f32 %v6794, 0.0
  %v6859 = vmax.f32 %v6795, 0.0
  %v6860 = vmax.f32 %v6796, 0.0
  %v6861 = vmax.f32 %v6797, 0.0
  %v6862 = vmax.f32 %v6798, 0.0
  %v6863 = vmax.f32 %v6799, 0.0
  %v6864 = vmax.f32 %v6800, 0.0
  %v6865 = vmax.f32 %v6801, 0.0
  %v6866 = vmax.f32 %v6802, 0.0
  %v6867 = vmax.f32 %v6803, 0.0
  %v6868 = vmax.f32 %v6804, 0.0
  %v6869 = vmax.f32 %v6805, 0.0
  %v6870 = vmax.f32 %v6806, 0.0
  %v6871 = vmax.f32 %v6807, 0.0
  %v6872 = vmax.f32 %v6808, 0.0
  %v6873 = vmax.f32 %v6809, 0.0
  %v6874 = vmax.f32 %v6810, 0.0
  %v6875 = vmax.f32 %v6811, 0.0
  %v6876 = vmax.f32 %v6812, 0.0
  %v6877 = vmax.f32 %v6813, 0.0
  %v6878 = vmax.f32 %v6814, 0.0
  %v6879 = vmax.f32 %v6815, 0.0
  %v6880 = vmax.f32 %v6816, 0.0
  %v6881 = vmax.f32 %v6817, 0.0
  %v6882 = vmax.f32 %v6818, 0.0
  %v6883 = vmax.f32 %v6819, 0.0
  %v6884 = vmax.f32 %v6820, 0.0
  %v6885 = vmax.f32 %v6821, 0.0
  %v6886 = vmax.f32 %v6822, 0.0
  %v6887 = vmax.f32 %v6823, 0.0
  %v6888 = vmax.f32 %v6824, 0.0
  %v6889 = vmax.f32 %v6825, 0.0
  %v6890 = vmax.f32 %v6826, 0.0
  %v6891 = vmax.f32 %v6827, 0.0
  %v6892 = vmax.f32 %v6828, 0.0
  %v6893 = vmax.f32 %v6829, 0.0
  %v6894 = vmax.f32 %v6830, 0.0
  %v6895 = vmax.f32 %v6831, 0.0
  %v6896 = vmax.f32 %v6832, 0.0
  %v6897 = vmax.f32 %v6833, 0.0
  %v6898 = vmax.f32 %v6834, 0.0
  %v6899 = vmax.f32 %v6835, 0.0
  %v6900 = vmax.f32 %v6836, 0.0
  %v6901 = vmax.f32 %v6837, 0.0
  %v6902 = vmax.f32 %v6838, 0.0
  %v6903 = vmax.f32 %v6839, 0.0
  %v6904 = vmax.f32 %v6840, 0.0
  %v6905 = vmax.f32 %v6841, 0.0
  %v6906 = vmax.f32 %v6842, 0.0
  %v6907 = vmax.f32 %v6843, 0.0
  %v6908 = vmax.f32 %v6844, 0.0
  %v6909 = vmax.f32 %v6845, 0.0
  %6910 = vst.msk [vmem:[%s202 + $0x1] sm:$0xff] %vm28, %v6846
  %6911 = vst.msk [vmem:[%s202 + $0x9] sm:$0xff] %vm28, %v6847
  %6912 = vst.msk [vmem:[%s202 + $0x19] sm:$0xff] %vm28, %v6848
  %6913 = vst.msk [vmem:[%s202 + $0x21] sm:$0xff] %vm28, %v6849
  %6914 = vst.msk [vmem:[%s202 + $0x31] sm:$0xff] %vm28, %v6850
  %6915 = vst.msk [vmem:[%s202 + $0x39] sm:$0xff] %vm28, %v6851
  %6916 = vst.msk [vmem:[%s202 + $0x49] sm:$0xff] %vm28, %v6852
  %6917 = vst.msk [vmem:[%s202 + $0x51] sm:$0xff] %vm28, %v6853
  %6918 = vst.msk [vmem:[%s202 + $0x61] sm:$0xff] %vm28, %v6854
  %6919 = vst.msk [vmem:[%s202 + $0x69] sm:$0xff] %vm28, %v6855
  %6920 = vst.msk [vmem:[%s202 + $0x79] sm:$0xff] %vm28, %v6856
  %6921 = vst.msk [vmem:[%s202 + $0x81] sm:$0xff] %vm28, %v6857
  %6922 = vst.msk [vmem:[%s202 + $0x91] sm:$0xff] %vm28, %v6858
  %6923 = vst.msk [vmem:[%s202 + $0x99] sm:$0xff] %vm28, %v6859
  %6924 = vst.msk [vmem:[%s202 + $0xa9] sm:$0xff] %vm28, %v6860
  %6925 = vst.msk [vmem:[%s202 + $0xb1] sm:$0xff] %vm28, %v6861
  %6926 = vst.msk [vmem:[%s202 + $0xc1] sm:$0xff] %vm28, %v6862
  %6927 = vst.msk [vmem:[%s202 + $0xc9] sm:$0xff] %vm28, %v6863
  %6928 = vst.msk [vmem:[%s202 + $0xd9] sm:$0xff] %vm28, %v6864
  %6929 = vst.msk [vmem:[%s202 + $0xe1] sm:$0xff] %vm28, %v6865
  %6930 = vst.msk [vmem:[%s202 + $0xf1] sm:$0xff] %vm28, %v6866
  %6931 = vst.msk [vmem:[%s202 + $0xf9] sm:$0xff] %vm28, %v6867
  %6932 = vst.msk [vmem:[%s202 + $0x109] sm:$0xff] %vm28, %v6868
  %6933 = vst.msk [vmem:[%s202 + $0x111] sm:$0xff] %vm28, %v6869
  %6934 = vst.msk [vmem:[%s202 + $0x121] sm:$0xff] %vm28, %v6870
  %6935 = vst.msk [vmem:[%s202 + $0x129] sm:$0xff] %vm28, %v6871
  %6936 = vst.msk [vmem:[%s202 + $0x139] sm:$0xff] %vm28, %v6872
  %6937 = vst.msk [vmem:[%s202 + $0x141] sm:$0xff] %vm28, %v6873
  %6938 = vst.msk [vmem:[%s202 + $0x151] sm:$0xff] %vm28, %v6874
  %6939 = vst.msk [vmem:[%s202 + $0x159] sm:$0xff] %vm28, %v6875
  %6940 = vst.msk [vmem:[%s202 + $0x169] sm:$0xff] %vm28, %v6876
  %6941 = vst.msk [vmem:[%s202 + $0x171] sm:$0xff] %vm28, %v6877
  %6942 = vst.msk [vmem:[%s202 + $0x1b1] sm:$0xff] %vm28, %v6878
  %6943 = vst.msk [vmem:[%s202 + $0x1b9] sm:$0xff] %vm28, %v6879
  %6944 = vst.msk [vmem:[%s202 + $0x1c9] sm:$0xff] %vm28, %v6880
  %6945 = vst.msk [vmem:[%s202 + $0x1d1] sm:$0xff] %vm28, %v6881
  %6946 = vst.msk [vmem:[%s202 + $0x1e1] sm:$0xff] %vm28, %v6882
  %6947 = vst.msk [vmem:[%s202 + $0x1e9] sm:$0xff] %vm28, %v6883
  %6948 = vst.msk [vmem:[%s202 + $0x1f9] sm:$0xff] %vm28, %v6884
  %6949 = vst.msk [vmem:[%s202 + $0x201] sm:$0xff] %vm28, %v6885
  %6950 = vst.msk [vmem:[%s202 + $0x211] sm:$0xff] %vm28, %v6886
  %6951 = vst.msk [vmem:[%s202 + $0x219] sm:$0xff] %vm28, %v6887
  %6952 = vst.msk [vmem:[%s202 + $0x229] sm:$0xff] %vm28, %v6888
  %6953 = vst.msk [vmem:[%s202 + $0x231] sm:$0xff] %vm28, %v6889
  %6954 = vst.msk [vmem:[%s202 + $0x241] sm:$0xff] %vm28, %v6890
  %6955 = vst.msk [vmem:[%s202 + $0x249] sm:$0xff] %vm28, %v6891
  %6956 = vst.msk [vmem:[%s202 + $0x259] sm:$0xff] %vm28, %v6892
  %6957 = vst.msk [vmem:[%s202 + $0x261] sm:$0xff] %vm28, %v6893
  %6958 = vst.msk [vmem:[%s202 + $0x271] sm:$0xff] %vm28, %v6894
  %6959 = vst.msk [vmem:[%s202 + $0x279] sm:$0xff] %vm28, %v6895
  %6960 = vst.msk [vmem:[%s202 + $0x289] sm:$0xff] %vm28, %v6896
  %6961 = vst.msk [vmem:[%s202 + $0x291] sm:$0xff] %vm28, %v6897
  %6962 = vst.msk [vmem:[%s202 + $0x2a1] sm:$0xff] %vm28, %v6898
  %6963 = vst.msk [vmem:[%s202 + $0x2a9] sm:$0xff] %vm28, %v6899
  %6964 = vst.msk [vmem:[%s202 + $0x2b9] sm:$0xff] %vm28, %v6900
  %6965 = vst.msk [vmem:[%s202 + $0x2c1] sm:$0xff] %vm28, %v6901
  %6966 = vst.msk [vmem:[%s202 + $0x2d1] sm:$0xff] %vm28, %v6902
  %6967 = vst.msk [vmem:[%s202 + $0x2d9] sm:$0xff] %vm28, %v6903
  %6968 = vst.msk [vmem:[%s202 + $0x2e9] sm:$0xff] %vm28, %v6904
  %6969 = vst.msk [vmem:[%s202 + $0x2f1] sm:$0xff] %vm28, %v6905
  %6970 = vst.msk [vmem:[%s202 + $0x301] sm:$0xff] %vm28, %v6906
  %6971 = vst.msk [vmem:[%s202 + $0x309] sm:$0xff] %vm28, %v6907
  %6972 = vst.msk [vmem:[%s202 + $0x319] sm:$0xff] %vm28, %v6908
  %6973 = vst.msk [vmem:[%s202 + $0x321] sm:$0xff] %vm28, %v6909
  %v6974 = vld [vmem:[%s5] sm:$0x1]
  %v6975 = vld [vmem:[%s6] sm:$0x1]
  %v6976 = vld [vmem:[#allocation2] sm:$0xff]
  %v6977 = vld [vmem:[#allocation2 + $0x8] sm:$0xff]
  %v6978 = vld [vmem:[#allocation2 + $0x18] sm:$0xff]
  %v6979 = vld [vmem:[#allocation2 + $0x20] sm:$0xff]
  %v6980 = vld [vmem:[#allocation2 + $0x30] sm:$0xff]
  %v6981 = vld [vmem:[#allocation2 + $0x38] sm:$0xff]
  %v6982 = vld [vmem:[#allocation2 + $0x48] sm:$0xff]
  %v6983 = vld [vmem:[#allocation2 + $0x50] sm:$0xff]
  %v6984 = vld [vmem:[#allocation2 + $0x60] sm:$0xff]
  %v6985 = vld [vmem:[#allocation2 + $0x68] sm:$0xff]
  %v6986 = vld [vmem:[#allocation2 + $0x78] sm:$0xff]
  %v6987 = vld [vmem:[#allocation2 + $0x80] sm:$0xff]
  %v6988 = vld [vmem:[#allocation2 + $0x90] sm:$0xff]
  %v6989 = vld [vmem:[#allocation2 + $0x98] sm:$0xff]
  %v6990 = vld [vmem:[#allocation2 + $0xa8] sm:$0xff]
  %v6991 = vld [vmem:[#allocation2 + $0xb0] sm:$0xff]
  %v6992 = vld [vmem:[#allocation2 + $0xc0] sm:$0xff]
  %v6993 = vld [vmem:[#allocation2 + $0xc8] sm:$0xff]
  %v6994 = vld [vmem:[#allocation2 + $0xd8] sm:$0xff]
  %v6995 = vld [vmem:[#allocation2 + $0xe0] sm:$0xff]
  %v6996 = vld [vmem:[#allocation2 + $0xf0] sm:$0xff]
  %v6997 = vld [vmem:[#allocation2 + $0xf8] sm:$0xff]
  %v6998 = vld [vmem:[#allocation2 + $0x108] sm:$0xff]
  %v6999 = vld [vmem:[#allocation2 + $0x110] sm:$0xff]
  %v7000 = vld [vmem:[#allocation2 + $0x120] sm:$0xff]
  %v7001 = vld [vmem:[#allocation2 + $0x128] sm:$0xff]
  %v7002 = vld [vmem:[#allocation2 + $0x138] sm:$0xff]
  %v7003 = vld [vmem:[#allocation2 + $0x140] sm:$0xff]
  %v7004 = vld [vmem:[#allocation2 + $0x150] sm:$0xff]
  %v7005 = vld [vmem:[#allocation2 + $0x158] sm:$0xff]
  %v7006 = vld [vmem:[#allocation2 + $0x168] sm:$0xff]
  %v7007 = vld [vmem:[#allocation2 + $0x170] sm:$0xff]
  %v7008 = vld [vmem:[#allocation2 + $0x1b0] sm:$0xff]
  %v7009 = vld [vmem:[#allocation2 + $0x1b8] sm:$0xff]
  %v7010 = vld [vmem:[#allocation2 + $0x1c8] sm:$0xff]
  %v7011 = vld [vmem:[#allocation2 + $0x1d0] sm:$0xff]
  %v7012 = vld [vmem:[#allocation2 + $0x1e0] sm:$0xff]
  %v7013 = vld [vmem:[#allocation2 + $0x1e8] sm:$0xff]
  %v7014 = vld [vmem:[#allocation2 + $0x1f8] sm:$0xff]
  %v7015 = vld [vmem:[#allocation2 + $0x200] sm:$0xff]
  %v7016 = vld [vmem:[#allocation2 + $0x210] sm:$0xff]
  %v7017 = vld [vmem:[#allocation2 + $0x218] sm:$0xff]
  %v7018 = vld [vmem:[#allocation2 + $0x228] sm:$0xff]
  %v7019 = vld [vmem:[#allocation2 + $0x230] sm:$0xff]
  %v7020 = vld [vmem:[#allocation2 + $0x240] sm:$0xff]
  %v7021 = vld [vmem:[#allocation2 + $0x248] sm:$0xff]
  %v7022 = vld [vmem:[#allocation2 + $0x258] sm:$0xff]
  %v7023 = vld [vmem:[#allocation2 + $0x260] sm:$0xff]
  %v7024 = vld [vmem:[#allocation2 + $0x270] sm:$0xff]
  %v7025 = vld [vmem:[#allocation2 + $0x278] sm:$0xff]
  %v7026 = vld [vmem:[#allocation2 + $0x288] sm:$0xff]
  %v7027 = vld [vmem:[#allocation2 + $0x290] sm:$0xff]
  %v7028 = vld [vmem:[#allocation2 + $0x2a0] sm:$0xff]
  %v7029 = vld [vmem:[#allocation2 + $0x2a8] sm:$0xff]
  %v7030 = vld [vmem:[#allocation2 + $0x2b8] sm:$0xff]
  %v7031 = vld [vmem:[#allocation2 + $0x2c0] sm:$0xff]
  %v7032 = vld [vmem:[#allocation2 + $0x2d0] sm:$0xff]
  %v7033 = vld [vmem:[#allocation2 + $0x2d8] sm:$0xff]
  %v7034 = vld [vmem:[#allocation2 + $0x2e8] sm:$0xff]
  %v7035 = vld [vmem:[#allocation2 + $0x2f0] sm:$0xff]
  %v7036 = vld [vmem:[#allocation2 + $0x300] sm:$0xff]
  %v7037 = vld [vmem:[#allocation2 + $0x308] sm:$0xff]
  %v7038 = vld [vmem:[#allocation2 + $0x318] sm:$0xff]
  %v7039 = vld [vmem:[#allocation2 + $0x320] sm:$0xff]
  %v7040 = vld [vmem:[%s2] sm:$0xff]
  %v7041 = vld [vmem:[#allocation2 + $0x1] sm:$0xff]
  %v7042 = vld [vmem:[#allocation2 + $0x9] sm:$0xff]
  %v7043 = vld [vmem:[#allocation2 + $0x19] sm:$0xff]
  %v7044 = vld [vmem:[#allocation2 + $0x21] sm:$0xff]
  %v7045 = vld [vmem:[#allocation2 + $0x31] sm:$0xff]
  %v7046 = vld [vmem:[#allocation2 + $0x39] sm:$0xff]
  %v7047 = vld [vmem:[#allocation2 + $0x49] sm:$0xff]
  %v7048 = vld [vmem:[#allocation2 + $0x51] sm:$0xff]
  %v7049 = vld [vmem:[#allocation2 + $0x61] sm:$0xff]
  %v7050 = vld [vmem:[#allocation2 + $0x69] sm:$0xff]
  %v7051 = vld [vmem:[#allocation2 + $0x79] sm:$0xff]
  %v7052 = vld [vmem:[#allocation2 + $0x81] sm:$0xff]
  %v7053 = vld [vmem:[#allocation2 + $0x91] sm:$0xff]
  %v7054 = vld [vmem:[#allocation2 + $0x99] sm:$0xff]
  %v7055 = vld [vmem:[#allocation2 + $0xa9] sm:$0xff]
  %v7056 = vld [vmem:[#allocation2 + $0xb1] sm:$0xff]
  %v7057 = vld [vmem:[#allocation2 + $0xc1] sm:$0xff]
  %v7058 = vld [vmem:[#allocation2 + $0xc9] sm:$0xff]
  %v7059 = vld [vmem:[#allocation2 + $0xd9] sm:$0xff]
  %v7060 = vld [vmem:[#allocation2 + $0xe1] sm:$0xff]
  %v7061 = vld [vmem:[#allocation2 + $0xf1] sm:$0xff]
  %v7062 = vld [vmem:[#allocation2 + $0xf9] sm:$0xff]
  %v7063 = vld [vmem:[#allocation2 + $0x109] sm:$0xff]
  %v7064 = vld [vmem:[#allocation2 + $0x111] sm:$0xff]
  %v7065 = vld [vmem:[#allocation2 + $0x121] sm:$0xff]
  %v7066 = vld [vmem:[#allocation2 + $0x129] sm:$0xff]
  %v7067 = vld [vmem:[#allocation2 + $0x139] sm:$0xff]
  %v7068 = vld [vmem:[#allocation2 + $0x141] sm:$0xff]
  %v7069 = vld [vmem:[#allocation2 + $0x151] sm:$0xff]
  %v7070 = vld [vmem:[#allocation2 + $0x159] sm:$0xff]
  %v7071 = vld [vmem:[#allocation2 + $0x169] sm:$0xff]
  %v7072 = vld [vmem:[#allocation2 + $0x171] sm:$0xff]
  %v7073 = vld [vmem:[#allocation2 + $0x1b1] sm:$0xff]
  %v7074 = vld [vmem:[#allocation2 + $0x1b9] sm:$0xff]
  %v7075 = vld [vmem:[#allocation2 + $0x1c9] sm:$0xff]
  %v7076 = vld [vmem:[#allocation2 + $0x1d1] sm:$0xff]
  %v7077 = vld [vmem:[#allocation2 + $0x1e1] sm:$0xff]
  %v7078 = vld [vmem:[#allocation2 + $0x1e9] sm:$0xff]
  %v7079 = vld [vmem:[#allocation2 + $0x1f9] sm:$0xff]
  %v7080 = vld [vmem:[#allocation2 + $0x201] sm:$0xff]
  %v7081 = vld [vmem:[#allocation2 + $0x211] sm:$0xff]
  %v7082 = vld [vmem:[#allocation2 + $0x219] sm:$0xff]
  %v7083 = vld [vmem:[#allocation2 + $0x229] sm:$0xff]
  %v7084 = vld [vmem:[#allocation2 + $0x231] sm:$0xff]
  %v7085 = vld [vmem:[#allocation2 + $0x241] sm:$0xff]
  %v7086 = vld [vmem:[#allocation2 + $0x249] sm:$0xff]
  %v7087 = vld [vmem:[#allocation2 + $0x259] sm:$0xff]
  %v7088 = vld [vmem:[#allocation2 + $0x261] sm:$0xff]
  %v7089 = vld [vmem:[#allocation2 + $0x271] sm:$0xff]
  %v7090 = vld [vmem:[#allocation2 + $0x279] sm:$0xff]
  %v7091 = vld [vmem:[#allocation2 + $0x289] sm:$0xff]
  %v7092 = vld [vmem:[#allocation2 + $0x291] sm:$0xff]
  %v7093 = vld [vmem:[#allocation2 + $0x2a1] sm:$0xff]
  %v7094 = vld [vmem:[#allocation2 + $0x2a9] sm:$0xff]
  %v7095 = vld [vmem:[#allocation2 + $0x2b9] sm:$0xff]
  %v7096 = vld [vmem:[#allocation2 + $0x2c1] sm:$0xff]
  %v7097 = vld [vmem:[#allocation2 + $0x2d1] sm:$0xff]
  %v7098 = vld [vmem:[#allocation2 + $0x2d9] sm:$0xff]
  %v7099 = vld [vmem:[#allocation2 + $0x2e9] sm:$0xff]
  %v7100 = vld [vmem:[#allocation2 + $0x2f1] sm:$0xff]
  %v7101 = vld [vmem:[#allocation2 + $0x301] sm:$0xff]
  %v7102 = vld [vmem:[#allocation2 + $0x309] sm:$0xff]
  %v7103 = vld [vmem:[#allocation2 + $0x319] sm:$0xff]
  %v7104 = vld [vmem:[#allocation2 + $0x321] sm:$0xff]
  %v7105 = vld [vmem:[%s2 + $0x8] sm:$0xff]
  %v7107 = vsel %vm28, %v7041, 0
  %v7110 = vsel %vm28, %v7042, 0
  %v7113 = vsel %vm28, %v7043, 0
  %v7116 = vsel %vm28, %v7044, 0
  %v7119 = vsel %vm28, %v7045, 0
  %v7122 = vsel %vm28, %v7046, 0
  %v7125 = vsel %vm28, %v7047, 0
  %v7128 = vsel %vm28, %v7048, 0
  %v7131 = vsel %vm28, %v7049, 0
  %v7134 = vsel %vm28, %v7050, 0
  %v7137 = vsel %vm28, %v7051, 0
  %v7140 = vsel %vm28, %v7052, 0
  %v7143 = vsel %vm28, %v7053, 0
  %v7146 = vsel %vm28, %v7054, 0
  %v7149 = vsel %vm28, %v7055, 0
  %v7152 = vsel %vm28, %v7056, 0
  %v7155 = vsel %vm28, %v7057, 0
  %v7158 = vsel %vm28, %v7058, 0
  %v7161 = vsel %vm28, %v7059, 0
  %v7164 = vsel %vm28, %v7060, 0
  %v7167 = vsel %vm28, %v7061, 0
  %v7170 = vsel %vm28, %v7062, 0
  %v7173 = vsel %vm28, %v7063, 0
  %v7176 = vsel %vm28, %v7064, 0
  %v7179 = vsel %vm28, %v7065, 0
  %v7182 = vsel %vm28, %v7066, 0
  %v7185 = vsel %vm28, %v7067, 0
  %v7188 = vsel %vm28, %v7068, 0
  %v7191 = vsel %vm28, %v7069, 0
  %v7194 = vsel %vm28, %v7070, 0
  %v7197 = vsel %vm28, %v7071, 0
  %v7200 = vsel %vm28, %v7072, 0
  %v7203 = vsel %vm28, %v7073, 0
  %v7206 = vsel %vm28, %v7074, 0
  %v7209 = vsel %vm28, %v7075, 0
  %v7212 = vsel %vm28, %v7076, 0
  %v7215 = vsel %vm28, %v7077, 0
  %v7218 = vsel %vm28, %v7078, 0
  %v7221 = vsel %vm28, %v7079, 0
  %v7224 = vsel %vm28, %v7080, 0
  %v7227 = vsel %vm28, %v7081, 0
  %v7230 = vsel %vm28, %v7082, 0
  %v7233 = vsel %vm28, %v7083, 0
  %v7236 = vsel %vm28, %v7084, 0
  %v7239 = vsel %vm28, %v7085, 0
  %v7242 = vsel %vm28, %v7086, 0
  %v7245 = vsel %vm28, %v7087, 0
  %v7248 = vsel %vm28, %v7088, 0
  %v7251 = vsel %vm28, %v7089, 0
  %v7254 = vsel %vm28, %v7090, 0
  %v7257 = vsel %vm28, %v7091, 0
  %v7260 = vsel %vm28, %v7092, 0
  %v7263 = vsel %vm28, %v7093, 0
  %v7266 = vsel %vm28, %v7094, 0
  %v7269 = vsel %vm28, %v7095, 0
  %v7272 = vsel %vm28, %v7096, 0
  %v7275 = vsel %vm28, %v7097, 0
  %v7278 = vsel %vm28, %v7098, 0
  %v7281 = vsel %vm28, %v7099, 0
  %v7284 = vsel %vm28, %v7100, 0
  %v7287 = vsel %vm28, %v7101, 0
  %v7290 = vsel %vm28, %v7102, 0
  %v7293 = vsel %vm28, %v7103, 0
  %v7296 = vsel %vm28, %v7104, 0
  %7298 = vmatprep.subr.mxu0 0.0
  %7299 = vmatpush1.msra.mxu0 %v7105
  %7300 = vmatprep.subr.mxu0 0.0
  %7301 = vmatpush1.msra.mxu0 0.0
  %7302 = vmatprep.subr.mxu0 0.0
  %7303 = vmatpush1.msra.mxu0 0.0
  %7304 = vmatprep.subr.mxu0 0.0
  %7305 = vmatpush1.msra.mxu0 0.0
  %7306 = vmatprep.subr.mxu0 0.0
  %7307 = vmatpush1.msra.mxu0 0.0
  %7308 = vmatprep.subr.mxu0 0.0
  %7309 = vmatpush1.msra.mxu0 0.0
  %7310 = vmatprep.subr.mxu0 0.0
  %7311 = vmatpush1.msra.mxu0 0.0
  %7312 = vmatprep.subr.mxu0 0.0
  %7313 = vmatpush1.msra.mxu0 0.0
  %7314 = vmatprep.subr.mxu0 0.0
  %7315 = vmatpush1.msra.mxu0 0.0
  %7316 = vmatprep.subr.mxu0 0.0
  %7317 = vmatpush1.msra.mxu0 0.0
  %7318 = vmatprep.subr.mxu0 0.0
  %7319 = vmatpush1.msra.mxu0 0.0
  %7320 = vmatprep.subr.mxu0 0.0
  %7321 = vmatpush1.msra.mxu0 0.0
  %7322 = vmatprep.subr.mxu0 0.0
  %7323 = vmatpush1.msra.mxu0 0.0
  %7324 = vmatprep.subr.mxu0 0.0
  %7325 = vmatpush1.msra.mxu0 0.0
  %7326 = vmatprep.subr.mxu0 0.0
  %7327 = vmatpush1.msra.mxu0 0.0
  %7328 = vmatprep.subr.mxu0 0.0
  %7329 = vmatpush1.msra.mxu0 0.0
  %7330 = vmatprep.subr.mxu0 0.0
  %7331 = vmatpush1.msra.mxu0 0.0
  %7332 = vmatprep.subr.mxu0 0.0
  %7333 = vmatpush1.msra.mxu0 0.0
  %7334 = vmatprep.subr.mxu0 0.0
  %7335 = vmatpush1.msra.mxu0 0.0
  %7336 = vmatprep.subr.mxu0 0.0
  %7337 = vmatpush1.msra.mxu0 0.0
  %7338 = vmatprep.subr.mxu0 0.0
  %7339 = vmatpush1.msra.mxu0 0.0
  %7340 = vmatprep.subr.mxu0 0.0
  %7341 = vmatpush1.msra.mxu0 0.0
  %7342 = vmatprep.subr.mxu0 0.0
  %7343 = vmatpush1.msra.mxu0 0.0
  %7344 = vmatprep.subr.mxu0 0.0
  %7345 = vmatpush1.msra.mxu0 0.0
  %7346 = vmatprep.subr.mxu0 0.0
  %7347 = vmatpush1.msra.mxu0 0.0
  %7348 = vmatprep.subr.mxu0 0.0
  %7349 = vmatpush1.msra.mxu0 0.0
  %7350 = vmatprep.subr.mxu0 0.0
  %7351 = vmatpush1.msra.mxu0 0.0
  %7352 = vmatprep.subr.mxu0 0.0
  %7353 = vmatpush1.msra.mxu0 0.0
  %7354 = vmatprep.subr.mxu0 0.0
  %7355 = vmatpush1.msra.mxu0 0.0
  %7356 = vmatprep.subr.mxu0 0.0
  %7357 = vmatpush1.msra.mxu0 0.0
  %7358 = vmatprep.subr.mxu0 0.0
  %7359 = vmatpush1.msra.mxu0 0.0
  %7360 = vmatprep.subr.mxu0 0.0
  %7361 = vmatpush1.msra.mxu0 0.0
  %7362 = vmatprep.mubr.f32.mxu0 0.0
  %7363 = vmatmul.mubr.f32.gmra.mrb[0].mxu0 %v7107
  %v7364 = vpop.f32.mrb[0].mxu0
  %v7365 = vadd.f32 0.0, %v7364
  %v7366 = vpop.f32.mrb[0].mxu0
  %7367 = vmatprep.mubr.f32.mxu0 0.0
  %7368 = vmatmul.mubr.f32.gmra.mrb[0].mxu0 %v7110
  %v7369 = vpop.f32.mrb[0].mxu0
  %v7370 = vadd.f32 0.0, %v7369
  %v7371 = vpop.f32.mrb[0].mxu0
  %7372 = vmatprep.mubr.f32.mxu0 0.0
  %7373 = vmatmul.mubr.f32.gmra.mrb[0].mxu0 %v7113
  %v7374 = vpop.f32.mrb[0].mxu0
  %v7375 = vadd.f32 0.0, %v7374
  %v7376 = vpop.f32.mrb[0].mxu0
  %7377 = vmatprep.mubr.f32.mxu0 0.0
  %7378 = vmatmul.mubr.f32.gmra.mrb[0].mxu0 %v7116
  %v7379 = vpop.f32.mrb[0].mxu0
  %v7380 = vadd.f32 0.0, %v7379
  %v7381 = vpop.f32.mrb[0].mxu0
  %7382 = vmatprep.mubr.f32.mxu0 0.0
  %7383 = vmatmul.mubr.f32.gmra.mrb[0].mxu0 %v7119
  %v7384 = vpop.f32.mrb[0].mxu0
  %v7385 = vadd.f32 0.0, %v7384
  %v7386 = vpop.f32.mrb[0].mxu0
  %7387 = vmatprep.mubr.f32.mxu0 0.0
  %7388 = vmatmul.mubr.f32.gmra.mrb[0].mxu0 %v7122
  %v7389 = vpop.f32.mrb[0].mxu0
  %v7390 = vadd.f32 0.0, %v7389
  %v7391 = vpop.f32.mrb[0].mxu0
  %7392 = vmatprep.mubr.f32.mxu0 0.0
  %7393 = vmatmul.mubr.f32.gmra.mrb[0].mxu0 %v7125
  %v7394 = vpop.f32.mrb[0].mxu0
  %v7395 = vadd.f32 0.0, %v7394
  %v7396 = vpop.f32.mrb[0].mxu0
  %7397 = vmatprep.mubr.f32.mxu0 0.0
  %7398 = vmatmul.mubr.f32.gmra.mrb[0].mxu0 %v7128
  %v7399 = vpop.f32.mrb[0].mxu0
  %v7400 = vadd.f32 0.0, %v7399
  %v7401 = vpop.f32.mrb[0].mxu0
  %7402 = vmatprep.mubr.f32.mxu0 0.0
  %7403 = vmatmul.mubr.f32.gmra.mrb[0].mxu0 %v7131
  %v7404 = vpop.f32.mrb[0].mxu0
  %v7405 = vadd.f32 0.0, %v7404
  %v7406 = vpop.f32.mrb[0].mxu0
  %7407 = vmatprep.mubr.f32.mxu0 0.0
  %7408 = vmatmul.mubr.f32.gmra.mrb[0].mxu0 %v7134
  %v7409 = vpop.f32.mrb[0].mxu0
  %v7410 = vadd.f32 0.0, %v7409
  %v7411 = vpop.f32.mrb[0].mxu0
  %7412 = vmatprep.mubr.f32.mxu0 0.0
  %7413 = vmatmul.mubr.f32.gmra.mrb[0].mxu0 %v7137
  %v7414 = vpop.f32.mrb[0].mxu0
  %v7415 = vadd.f32 0.0, %v7414
  %v7416 = vpop.f32.mrb[0].mxu0
  %7417 = vmatprep.mubr.f32.mxu0 0.0
  %7418 = vmatmul.mubr.f32.gmra.mrb[0].mxu0 %v7140
  %v7419 = vpop.f32.mrb[0].mxu0
  %v7420 = vadd.f32 0.0, %v7419
  %v7421 = vpop.f32.mrb[0].mxu0
  %7422 = vmatprep.mubr.f32.mxu0 0.0
  %7423 = vmatmul.mubr.f32.gmra.mrb[0].mxu0 %v7143
  %v7424 = vpop.f32.mrb[0].mxu0
  %v7425 = vadd.f32 0.0, %v7424
  %v7426 = vpop.f32.mrb[0].mxu0
  %7427 = vmatprep.mubr.f32.mxu0 0.0
  %7428 = vmatmul.mubr.f32.gmra.mrb[0].mxu0 %v7146
  %v7429 = vpop.f32.mrb[0].mxu0
  %v7430 = vadd.f32 0.0, %v7429
  %v7431 = vpop.f32.mrb[0].mxu0
  %7432 = vmatprep.mubr.f32.mxu0 0.0
  %7433 = vmatmul.mubr.f32.gmra.mrb[0].mxu0 %v7149
  %v7434 = vpop.f32.mrb[0].mxu0
  %v7435 = vadd.f32 0.0, %v7434
  %v7436 = vpop.f32.mrb[0].mxu0
  %7437 = vmatprep.mubr.f32.mxu0 0.0
  %7438 = vmatmul.mubr.f32.gmra.mrb[0].mxu0 %v7152
  %v7439 = vpop.f32.mrb[0].mxu0
  %v7440 = vadd.f32 0.0, %v7439
  %v7441 = vpop.f32.mrb[0].mxu0
  %7442 = vmatprep.mubr.f32.mxu0 0.0
  %7443 = vmatmul.mubr.f32.gmra.mrb[0].mxu0 %v7155
  %v7444 = vpop.f32.mrb[0].mxu0
  %v7445 = vadd.f32 0.0, %v7444
  %v7446 = vpop.f32.mrb[0].mxu0
  %7447 = vmatprep.mubr.f32.mxu0 0.0
  %7448 = vmatmul.mubr.f32.gmra.mrb[0].mxu0 %v7158
  %v7449 = vpop.f32.mrb[0].mxu0
  %v7450 = vadd.f32 0.0, %v7449
  %v7451 = vpop.f32.mrb[0].mxu0
  %7452 = vmatprep.mubr.f32.mxu0 0.0
  %7453 = vmatmul.mubr.f32.gmra.mrb[0].mxu0 %v7161
  %v7454 = vpop.f32.mrb[0].mxu0
  %v7455 = vadd.f32 0.0, %v7454
  %v7456 = vpop.f32.mrb[0].mxu0
  %7457 = vmatprep.mubr.f32.mxu0 0.0
  %7458 = vmatmul.mubr.f32.gmra.mrb[0].mxu0 %v7164
  %v7459 = vpop.f32.mrb[0].mxu0
  %v7460 = vadd.f32 0.0, %v7459
  %v7461 = vpop.f32.mrb[0].mxu0
  %7462 = vmatprep.mubr.f32.mxu0 0.0
  %7463 = vmatmul.mubr.f32.gmra.mrb[0].mxu0 %v7167
  %v7464 = vpop.f32.mrb[0].mxu0
  %v7465 = vadd.f32 0.0, %v7464
  %v7466 = vpop.f32.mrb[0].mxu0
  %7467 = vmatprep.mubr.f32.mxu0 0.0
  %7468 = vmatmul.mubr.f32.gmra.mrb[0].mxu0 %v7170
  %v7469 = vpop.f32.mrb[0].mxu0
  %v7470 = vadd.f32 0.0, %v7469
  %v7471 = vpop.f32.mrb[0].mxu0
  %7472 = vmatprep.mubr.f32.mxu0 0.0
  %7473 = vmatmul.mubr.f32.gmra.mrb[0].mxu0 %v7173
  %v7474 = vpop.f32.mrb[0].mxu0
  %v7475 = vadd.f32 0.0, %v7474
  %v7476 = vpop.f32.mrb[0].mxu0
  %7477 = vmatprep.mubr.f32.mxu0 0.0
  %7478 = vmatmul.mubr.f32.gmra.mrb[0].mxu0 %v7176
  %v7479 = vpop.f32.mrb[0].mxu0
  %v7480 = vadd.f32 0.0, %v7479
  %v7481 = vpop.f32.mrb[0].mxu0
  %7482 = vmatprep.mubr.f32.mxu0 0.0
  %7483 = vmatmul.mubr.f32.gmra.mrb[0].mxu0 %v7179
  %v7484 = vpop.f32.mrb[0].mxu0
  %v7485 = vadd.f32 0.0, %v7484
  %v7486 = vpop.f32.mrb[0].mxu0
  %7487 = vmatprep.mubr.f32.mxu0 0.0
  %7488 = vmatmul.mubr.f32.gmra.mrb[0].mxu0 %v7182
  %v7489 = vpop.f32.mrb[0].mxu0
  %v7490 = vadd.f32 0.0, %v7489
  %v7491 = vpop.f32.mrb[0].mxu0
  %7492 = vmatprep.mubr.f32.mxu0 0.0
  %7493 = vmatmul.mubr.f32.gmra.mrb[0].mxu0 %v7185
  %v7494 = vpop.f32.mrb[0].mxu0
  %v7495 = vadd.f32 0.0, %v7494
  %v7496 = vpop.f32.mrb[0].mxu0
  %7497 = vmatprep.mubr.f32.mxu0 0.0
  %7498 = vmatmul.mubr.f32.gmra.mrb[0].mxu0 %v7188
  %v7499 = vpop.f32.mrb[0].mxu0
  %v7500 = vadd.f32 0.0, %v7499
  %v7501 = vpop.f32.mrb[0].mxu0
  %7502 = vmatprep.mubr.f32.mxu0 0.0
  %7503 = vmatmul.mubr.f32.gmra.mrb[0].mxu0 %v7191
  %v7504 = vpop.f32.mrb[0].mxu0
  %v7505 = vadd.f32 0.0, %v7504
  %v7506 = vpop.f32.mrb[0].mxu0
  %7507 = vmatprep.mubr.f32.mxu0 0.0
  %7508 = vmatmul.mubr.f32.gmra.mrb[0].mxu0 %v7194
  %v7509 = vpop.f32.mrb[0].mxu0
  %v7510 = vadd.f32 0.0, %v7509
  %v7511 = vpop.f32.mrb[0].mxu0
  %7512 = vmatprep.mubr.f32.mxu0 0.0
  %7513 = vmatmul.mubr.f32.gmra.mrb[0].mxu0 %v7197
  %v7514 = vpop.f32.mrb[0].mxu0
  %v7515 = vadd.f32 0.0, %v7514
  %v7516 = vpop.f32.mrb[0].mxu0
  %7517 = vmatprep.mubr.f32.mxu0 0.0
  %7518 = vmatmul.mubr.f32.gmra.mrb[0].mxu0 %v7200
  %v7519 = vpop.f32.mrb[0].mxu0
  %v7520 = vadd.f32 0.0, %v7519
  %v7521 = vpop.f32.mrb[0].mxu0
  %7522 = vmatprep.mubr.f32.mxu0 0.0
  %7523 = vmatmul.mubr.f32.gmra.mrb[0].mxu0 %v7203
  %v7524 = vpop.f32.mrb[0].mxu0
  %v7525 = vadd.f32 0.0, %v7524
  %v7526 = vpop.f32.mrb[0].mxu0
  %7527 = vmatprep.mubr.f32.mxu0 0.0
  %7528 = vmatmul.mubr.f32.gmra.mrb[0].mxu0 %v7206
  %v7529 = vpop.f32.mrb[0].mxu0
  %v7530 = vadd.f32 0.0, %v7529
  %v7531 = vpop.f32.mrb[0].mxu0
  %7532 = vmatprep.mubr.f32.mxu0 0.0
  %7533 = vmatmul.mubr.f32.gmra.mrb[0].mxu0 %v7209
  %v7534 = vpop.f32.mrb[0].mxu0
  %v7535 = vadd.f32 0.0, %v7534
  %v7536 = vpop.f32.mrb[0].mxu0
  %7537 = vmatprep.mubr.f32.mxu0 0.0
  %7538 = vmatmul.mubr.f32.gmra.mrb[0].mxu0 %v7212
  %v7539 = vpop.f32.mrb[0].mxu0
  %v7540 = vadd.f32 0.0, %v7539
  %v7541 = vpop.f32.mrb[0].mxu0
  %7542 = vmatprep.mubr.f32.mxu0 0.0
  %7543 = vmatmul.mubr.f32.gmra.mrb[0].mxu0 %v7215
  %v7544 = vpop.f32.mrb[0].mxu0
  %v7545 = vadd.f32 0.0, %v7544
  %v7546 = vpop.f32.mrb[0].mxu0
  %7547 = vmatprep.mubr.f32.mxu0 0.0
  %7548 = vmatmul.mubr.f32.gmra.mrb[0].mxu0 %v7218
  %v7549 = vpop.f32.mrb[0].mxu0
  %v7550 = vadd.f32 0.0, %v7549
  %v7551 = vpop.f32.mrb[0].mxu0
  %7552 = vmatprep.mubr.f32.mxu0 0.0
  %7553 = vmatmul.mubr.f32.gmra.mrb[0].mxu0 %v7221
  %v7554 = vpop.f32.mrb[0].mxu0
  %v7555 = vadd.f32 0.0, %v7554
  %v7556 = vpop.f32.mrb[0].mxu0
  %7557 = vmatprep.mubr.f32.mxu0 0.0
  %7558 = vmatmul.mubr.f32.gmra.mrb[0].mxu0 %v7224
  %v7559 = vpop.f32.mrb[0].mxu0
  %v7560 = vadd.f32 0.0, %v7559
  %v7561 = vpop.f32.mrb[0].mxu0
  %7562 = vmatprep.mubr.f32.mxu0 0.0
  %7563 = vmatmul.mubr.f32.gmra.mrb[0].mxu0 %v7227
  %v7564 = vpop.f32.mrb[0].mxu0
  %v7565 = vadd.f32 0.0, %v7564
  %v7566 = vpop.f32.mrb[0].mxu0
  %7567 = vmatprep.mubr.f32.mxu0 0.0
  %7568 = vmatmul.mubr.f32.gmra.mrb[0].mxu0 %v7230
  %v7569 = vpop.f32.mrb[0].mxu0
  %v7570 = vadd.f32 0.0, %v7569
  %v7571 = vpop.f32.mrb[0].mxu0
  %7572 = vmatprep.mubr.f32.mxu0 0.0
  %7573 = vmatmul.mubr.f32.gmra.mrb[0].mxu0 %v7233
  %v7574 = vpop.f32.mrb[0].mxu0
  %v7575 = vadd.f32 0.0, %v7574
  %v7576 = vpop.f32.mrb[0].mxu0
  %7577 = vmatprep.mubr.f32.mxu0 0.0
  %7578 = vmatmul.mubr.f32.gmra.mrb[0].mxu0 %v7236
  %v7579 = vpop.f32.mrb[0].mxu0
  %v7580 = vadd.f32 0.0, %v7579
  %v7581 = vpop.f32.mrb[0].mxu0
  %7582 = vmatprep.mubr.f32.mxu0 0.0
  %7583 = vmatmul.mubr.f32.gmra.mrb[0].mxu0 %v7239
  %v7584 = vpop.f32.mrb[0].mxu0
  %v7585 = vadd.f32 0.0, %v7584
  %v7586 = vpop.f32.mrb[0].mxu0
  %7587 = vmatprep.mubr.f32.mxu0 0.0
  %7588 = vmatmul.mubr.f32.gmra.mrb[0].mxu0 %v7242
  %v7589 = vpop.f32.mrb[0].mxu0
  %v7590 = vadd.f32 0.0, %v7589
  %v7591 = vpop.f32.mrb[0].mxu0
  %7592 = vmatprep.mubr.f32.mxu0 0.0
  %7593 = vmatmul.mubr.f32.gmra.mrb[0].mxu0 %v7245
  %v7594 = vpop.f32.mrb[0].mxu0
  %v7595 = vadd.f32 0.0, %v7594
  %v7596 = vpop.f32.mrb[0].mxu0
  %7597 = vmatprep.mubr.f32.mxu0 0.0
  %7598 = vmatmul.mubr.f32.gmra.mrb[0].mxu0 %v7248
  %v7599 = vpop.f32.mrb[0].mxu0
  %v7600 = vadd.f32 0.0, %v7599
  %v7601 = vpop.f32.mrb[0].mxu0
  %7602 = vmatprep.mubr.f32.mxu0 0.0
  %7603 = vmatmul.mubr.f32.gmra.mrb[0].mxu0 %v7251
  %v7604 = vpop.f32.mrb[0].mxu0
  %v7605 = vadd.f32 0.0, %v7604
  %v7606 = vpop.f32.mrb[0].mxu0
  %7607 = vmatprep.mubr.f32.mxu0 0.0
  %7608 = vmatmul.mubr.f32.gmra.mrb[0].mxu0 %v7254
  %v7609 = vpop.f32.mrb[0].mxu0
  %v7610 = vadd.f32 0.0, %v7609
  %v7611 = vpop.f32.mrb[0].mxu0
  %7612 = vmatprep.mubr.f32.mxu0 0.0
  %7613 = vmatmul.mubr.f32.gmra.mrb[0].mxu0 %v7257
  %v7614 = vpop.f32.mrb[0].mxu0
  %v7615 = vadd.f32 0.0, %v7614
  %v7616 = vpop.f32.mrb[0].mxu0
  %7617 = vmatprep.mubr.f32.mxu0 0.0
  %7618 = vmatmul.mubr.f32.gmra.mrb[0].mxu0 %v7260
  %v7619 = vpop.f32.mrb[0].mxu0
  %v7620 = vadd.f32 0.0, %v7619
  %v7621 = vpop.f32.mrb[0].mxu0
  %7622 = vmatprep.mubr.f32.mxu0 0.0
  %7623 = vmatmul.mubr.f32.gmra.mrb[0].mxu0 %v7263
  %v7624 = vpop.f32.mrb[0].mxu0
  %v7625 = vadd.f32 0.0, %v7624
  %v7626 = vpop.f32.mrb[0].mxu0
  %7627 = vmatprep.mubr.f32.mxu0 0.0
  %7628 = vmatmul.mubr.f32.gmra.mrb[0].mxu0 %v7266
  %v7629 = vpop.f32.mrb[0].mxu0
  %v7630 = vadd.f32 0.0, %v7629
  %v7631 = vpop.f32.mrb[0].mxu0
  %7632 = vmatprep.mubr.f32.mxu0 0.0
  %7633 = vmatmul.mubr.f32.gmra.mrb[0].mxu0 %v7269
  %v7634 = vpop.f32.mrb[0].mxu0
  %v7635 = vadd.f32 0.0, %v7634
  %v7636 = vpop.f32.mrb[0].mxu0
  %7637 = vmatprep.mubr.f32.mxu0 0.0
  %7638 = vmatmul.mubr.f32.gmra.mrb[0].mxu0 %v7272
  %v7639 = vpop.f32.mrb[0].mxu0
  %v7640 = vadd.f32 0.0, %v7639
  %v7641 = vpop.f32.mrb[0].mxu0
  %7642 = vmatprep.mubr.f32.mxu0 0.0
  %7643 = vmatmul.mubr.f32.gmra.mrb[0].mxu0 %v7275
  %v7644 = vpop.f32.mrb[0].mxu0
  %v7645 = vadd.f32 0.0, %v7644
  %v7646 = vpop.f32.mrb[0].mxu0
  %7647 = vmatprep.mubr.f32.mxu0 0.0
  %7648 = vmatmul.mubr.f32.gmra.mrb[0].mxu0 %v7278
  %v7649 = vpop.f32.mrb[0].mxu0
  %v7650 = vadd.f32 0.0, %v7649
  %v7651 = vpop.f32.mrb[0].mxu0
  %7652 = vmatprep.mubr.f32.mxu0 0.0
  %7653 = vmatmul.mubr.f32.gmra.mrb[0].mxu0 %v7281
  %v7654 = vpop.f32.mrb[0].mxu0
  %v7655 = vadd.f32 0.0, %v7654
  %v7656 = vpop.f32.mrb[0].mxu0
  %7657 = vmatprep.mubr.f32.mxu0 0.0
  %7658 = vmatmul.mubr.f32.gmra.mrb[0].mxu0 %v7284
  %v7659 = vpop.f32.mrb[0].mxu0
  %v7660 = vadd.f32 0.0, %v7659
  %v7661 = vpop.f32.mrb[0].mxu0
  %7662 = vmatprep.mubr.f32.mxu0 0.0
  %7663 = vmatmul.mubr.f32.gmra.mrb[0].mxu0 %v7287
  %v7664 = vpop.f32.mrb[0].mxu0
  %v7665 = vadd.f32 0.0, %v7664
  %v7666 = vpop.f32.mrb[0].mxu0
  %7667 = vmatprep.mubr.f32.mxu0 0.0
  %7668 = vmatmul.mubr.f32.gmra.mrb[0].mxu0 %v7290
  %v7669 = vpop.f32.mrb[0].mxu0
  %v7670 = vadd.f32 0.0, %v7669
  %v7671 = vpop.f32.mrb[0].mxu0
  %7672 = vmatprep.mubr.f32.mxu0 0.0
  %7673 = vmatmul.mubr.f32.gmra.mrb[0].mxu0 %v7293
  %v7674 = vpop.f32.mrb[0].mxu0
  %v7675 = vadd.f32 0.0, %v7674
  %v7676 = vpop.f32.mrb[0].mxu0
  %7677 = vmatprep.mubr.f32.mxu0 0.0
  %7678 = vmatmul.mubr.f32.gmra.mrb[0].mxu0 %v7296
  %v7679 = vpop.f32.mrb[0].mxu0
  %v7680 = vadd.f32 0.0, %v7679
  %v7681 = vpop.f32.mrb[0].mxu0
  %7682 = vdwg.mxu0
  %v7684 = vsel %vm28, %v6976, 0
  %v7687 = vsel %vm28, %v6977, 0
  %v7690 = vsel %vm28, %v6978, 0
  %v7693 = vsel %vm28, %v6979, 0
  %v7696 = vsel %vm28, %v6980, 0
  %v7699 = vsel %vm28, %v6981, 0
  %v7702 = vsel %vm28, %v6982, 0
  %v7705 = vsel %vm28, %v6983, 0
  %v7708 = vsel %vm28, %v6984, 0
  %v7711 = vsel %vm28, %v6985, 0
  %v7714 = vsel %vm28, %v6986, 0
  %v7717 = vsel %vm28, %v6987, 0
  %v7720 = vsel %vm28, %v6988, 0
  %v7723 = vsel %vm28, %v6989, 0
  %v7726 = vsel %vm28, %v6990, 0
  %v7729 = vsel %vm28, %v6991, 0
  %v7732 = vsel %vm28, %v6992, 0
  %v7735 = vsel %vm28, %v6993, 0
  %v7738 = vsel %vm28, %v6994, 0
  %v7741 = vsel %vm28, %v6995, 0
  %v7744 = vsel %vm28, %v6996, 0
  %v7747 = vsel %vm28, %v6997, 0
  %v7750 = vsel %vm28, %v6998, 0
  %v7753 = vsel %vm28, %v6999, 0
  %v7756 = vsel %vm28, %v7000, 0
  %v7759 = vsel %vm28, %v7001, 0
  %v7762 = vsel %vm28, %v7002, 0
  %v7765 = vsel %vm28, %v7003, 0
  %v7768 = vsel %vm28, %v7004, 0
  %v7771 = vsel %vm28, %v7005, 0
  %v7774 = vsel %vm28, %v7006, 0
  %v7777 = vsel %vm28, %v7007, 0
  %v7780 = vsel %vm28, %v7008, 0
  %v7783 = vsel %vm28, %v7009, 0
  %v7786 = vsel %vm28, %v7010, 0
  %v7789 = vsel %vm28, %v7011, 0
  %v7792 = vsel %vm28, %v7012, 0
  %v7795 = vsel %vm28, %v7013, 0
  %v7798 = vsel %vm28, %v7014, 0
  %v7801 = vsel %vm28, %v7015, 0
  %v7804 = vsel %vm28, %v7016, 0
  %v7807 = vsel %vm28, %v7017, 0
  %v7810 = vsel %vm28, %v7018, 0
  %v7813 = vsel %vm28, %v7019, 0
  %v7816 = vsel %vm28, %v7020, 0
  %v7819 = vsel %vm28, %v7021, 0
  %v7822 = vsel %vm28, %v7022, 0
  %v7825 = vsel %vm28, %v7023, 0
  %v7828 = vsel %vm28, %v7024, 0
  %v7831 = vsel %vm28, %v7025, 0
  %v7834 = vsel %vm28, %v7026, 0
  %v7837 = vsel %vm28, %v7027, 0
  %v7840 = vsel %vm28, %v7028, 0
  %v7843 = vsel %vm28, %v7029, 0
  %v7846 = vsel %vm28, %v7030, 0
  %v7849 = vsel %vm28, %v7031, 0
  %v7852 = vsel %vm28, %v7032, 0
  %v7855 = vsel %vm28, %v7033, 0
  %v7858 = vsel %vm28, %v7034, 0
  %v7861 = vsel %vm28, %v7035, 0
  %v7864 = vsel %vm28, %v7036, 0
  %v7867 = vsel %vm28, %v7037, 0
  %v7870 = vsel %vm28, %v7038, 0
  %v7873 = vsel %vm28, %v7039, 0
  %7875 = vmatprep.subr.mxu0 0.0
  %7876 = vmatpush1.msra.mxu0 %v7040
  %7877 = vmatprep.subr.mxu0 0.0
  %7878 = vmatpush1.msra.mxu0 0.0
  %7879 = vmatprep.subr.mxu0 0.0
  %7880 = vmatpush1.msra.mxu0 0.0
  %7881 = vmatprep.subr.mxu0 0.0
  %7882 = vmatpush1.msra.mxu0 0.0
  %7883 = vmatprep.subr.mxu0 0.0
  %7884 = vmatpush1.msra.mxu0 0.0
  %7885 = vmatprep.subr.mxu0 0.0
  %7886 = vmatpush1.msra.mxu0 0.0
  %7887 = vmatprep.subr.mxu0 0.0
  %7888 = vmatpush1.msra.mxu0 0.0
  %7889 = vmatprep.subr.mxu0 0.0
  %7890 = vmatpush1.msra.mxu0 0.0
  %7891 = vmatprep.subr.mxu0 0.0
  %7892 = vmatpush1.msra.mxu0 0.0
  %7893 = vmatprep.subr.mxu0 0.0
  %7894 = vmatpush1.msra.mxu0 0.0
  %7895 = vmatprep.subr.mxu0 0.0
  %7896 = vmatpush1.msra.mxu0 0.0
  %7897 = vmatprep.subr.mxu0 0.0
  %7898 = vmatpush1.msra.mxu0 0.0
  %7899 = vmatprep.subr.mxu0 0.0
  %7900 = vmatpush1.msra.mxu0 0.0
  %7901 = vmatprep.subr.mxu0 0.0
  %7902 = vmatpush1.msra.mxu0 0.0
  %7903 = vmatprep.subr.mxu0 0.0
  %7904 = vmatpush1.msra.mxu0 0.0
  %7905 = vmatprep.subr.mxu0 0.0
  %7906 = vmatpush1.msra.mxu0 0.0
  %7907 = vmatprep.subr.mxu0 0.0
  %7908 = vmatpush1.msra.mxu0 0.0
  %7909 = vmatprep.subr.mxu0 0.0
  %7910 = vmatpush1.msra.mxu0 0.0
  %7911 = vmatprep.subr.mxu0 0.0
  %7912 = vmatpush1.msra.mxu0 0.0
  %7913 = vmatprep.subr.mxu0 0.0
  %7914 = vmatpush1.msra.mxu0 0.0
  %7915 = vmatprep.subr.mxu0 0.0
  %7916 = vmatpush1.msra.mxu0 0.0
  %7917 = vmatprep.subr.mxu0 0.0
  %7918 = vmatpush1.msra.mxu0 0.0
  %7919 = vmatprep.subr.mxu0 0.0
  %7920 = vmatpush1.msra.mxu0 0.0
  %7921 = vmatprep.subr.mxu0 0.0
  %7922 = vmatpush1.msra.mxu0 0.0
  %7923 = vmatprep.subr.mxu0 0.0
  %7924 = vmatpush1.msra.mxu0 0.0
  %7925 = vmatprep.subr.mxu0 0.0
  %7926 = vmatpush1.msra.mxu0 0.0
  %7927 = vmatprep.subr.mxu0 0.0
  %7928 = vmatpush1.msra.mxu0 0.0
  %7929 = vmatprep.subr.mxu0 0.0
  %7930 = vmatpush1.msra.mxu0 0.0
  %7931 = vmatprep.subr.mxu0 0.0
  %7932 = vmatpush1.msra.mxu0 0.0
  %7933 = vmatprep.subr.mxu0 0.0
  %7934 = vmatpush1.msra.mxu0 0.0
  %7935 = vmatprep.subr.mxu0 0.0
  %7936 = vmatpush1.msra.mxu0 0.0
  %7937 = vmatprep.subr.mxu0 0.0
  %7938 = vmatpush1.msra.mxu0 0.0
  %7939 = vmatprep.mubr.f32.mxu0 0.0
  %7940 = vmatmul.mubr.f32.gmra.mrb[0].mxu0 %v7684
  %v7941 = vpop.f32.mrb[0].mxu0
  %v7942 = vadd.f32 %v7365, %v7941
  %v7943 = vpop.f32.mrb[0].mxu0
  %7944 = vmatprep.mubr.f32.mxu0 0.0
  %7945 = vmatmul.mubr.f32.gmra.mrb[0].mxu0 %v7687
  %v7946 = vpop.f32.mrb[0].mxu0
  %v7947 = vadd.f32 %v7370, %v7946
  %v7948 = vpop.f32.mrb[0].mxu0
  %7949 = vmatprep.mubr.f32.mxu0 0.0
  %7950 = vmatmul.mubr.f32.gmra.mrb[0].mxu0 %v7690
  %v7951 = vpop.f32.mrb[0].mxu0
  %v7952 = vadd.f32 %v7375, %v7951
  %v7953 = vpop.f32.mrb[0].mxu0
  %7954 = vmatprep.mubr.f32.mxu0 0.0
  %7955 = vmatmul.mubr.f32.gmra.mrb[0].mxu0 %v7693
  %v7956 = vpop.f32.mrb[0].mxu0
  %v7957 = vadd.f32 %v7380, %v7956
  %v7958 = vpop.f32.mrb[0].mxu0
  %7959 = vmatprep.mubr.f32.mxu0 0.0
  %7960 = vmatmul.mubr.f32.gmra.mrb[0].mxu0 %v7696
  %v7961 = vpop.f32.mrb[0].mxu0
  %v7962 = vadd.f32 %v7385, %v7961
  %v7963 = vpop.f32.mrb[0].mxu0
  %7964 = vmatprep.mubr.f32.mxu0 0.0
  %7965 = vmatmul.mubr.f32.gmra.mrb[0].mxu0 %v7699
  %v7966 = vpop.f32.mrb[0].mxu0
  %v7967 = vadd.f32 %v7390, %v7966
  %v7968 = vpop.f32.mrb[0].mxu0
  %7969 = vmatprep.mubr.f32.mxu0 0.0
  %7970 = vmatmul.mubr.f32.gmra.mrb[0].mxu0 %v7702
  %v7971 = vpop.f32.mrb[0].mxu0
  %v7972 = vadd.f32 %v7395, %v7971
  %v7973 = vpop.f32.mrb[0].mxu0
  %7974 = vmatprep.mubr.f32.mxu0 0.0
  %7975 = vmatmul.mubr.f32.gmra.mrb[0].mxu0 %v7705
  %v7976 = vpop.f32.mrb[0].mxu0
  %v7977 = vadd.f32 %v7400, %v7976
  %v7978 = vpop.f32.mrb[0].mxu0
  %7979 = vmatprep.mubr.f32.mxu0 0.0
  %7980 = vmatmul.mubr.f32.gmra.mrb[0].mxu0 %v7708
  %v7981 = vpop.f32.mrb[0].mxu0
  %v7982 = vadd.f32 %v7405, %v7981
  %v7983 = vpop.f32.mrb[0].mxu0
  %7984 = vmatprep.mubr.f32.mxu0 0.0
  %7985 = vmatmul.mubr.f32.gmra.mrb[0].mxu0 %v7711
  %v7986 = vpop.f32.mrb[0].mxu0
  %v7987 = vadd.f32 %v7410, %v7986
  %v7988 = vpop.f32.mrb[0].mxu0
  %7989 = vmatprep.mubr.f32.mxu0 0.0
  %7990 = vmatmul.mubr.f32.gmra.mrb[0].mxu0 %v7714
  %v7991 = vpop.f32.mrb[0].mxu0
  %v7992 = vadd.f32 %v7415, %v7991
  %v7993 = vpop.f32.mrb[0].mxu0
  %7994 = vmatprep.mubr.f32.mxu0 0.0
  %7995 = vmatmul.mubr.f32.gmra.mrb[0].mxu0 %v7717
  %v7996 = vpop.f32.mrb[0].mxu0
  %v7997 = vadd.f32 %v7420, %v7996
  %v7998 = vpop.f32.mrb[0].mxu0
  %7999 = vmatprep.mubr.f32.mxu0 0.0
  %8000 = vmatmul.mubr.f32.gmra.mrb[0].mxu0 %v7720
  %v8001 = vpop.f32.mrb[0].mxu0
  %v8002 = vadd.f32 %v7425, %v8001
  %v8003 = vpop.f32.mrb[0].mxu0
  %8004 = vmatprep.mubr.f32.mxu0 0.0
  %8005 = vmatmul.mubr.f32.gmra.mrb[0].mxu0 %v7723
  %v8006 = vpop.f32.mrb[0].mxu0
  %v8007 = vadd.f32 %v7430, %v8006
  %v8008 = vpop.f32.mrb[0].mxu0
  %8009 = vmatprep.mubr.f32.mxu0 0.0
  %8010 = vmatmul.mubr.f32.gmra.mrb[0].mxu0 %v7726
  %v8011 = vpop.f32.mrb[0].mxu0
  %v8012 = vadd.f32 %v7435, %v8011
  %v8013 = vpop.f32.mrb[0].mxu0
  %8014 = vmatprep.mubr.f32.mxu0 0.0
  %8015 = vmatmul.mubr.f32.gmra.mrb[0].mxu0 %v7729
  %v8016 = vpop.f32.mrb[0].mxu0
  %v8017 = vadd.f32 %v7440, %v8016
  %v8018 = vpop.f32.mrb[0].mxu0
  %8019 = vmatprep.mubr.f32.mxu0 0.0
  %8020 = vmatmul.mubr.f32.gmra.mrb[0].mxu0 %v7732
  %v8021 = vpop.f32.mrb[0].mxu0
  %v8022 = vadd.f32 %v7445, %v8021
  %v8023 = vpop.f32.mrb[0].mxu0
  %8024 = vmatprep.mubr.f32.mxu0 0.0
  %8025 = vmatmul.mubr.f32.gmra.mrb[0].mxu0 %v7735
  %v8026 = vpop.f32.mrb[0].mxu0
  %v8027 = vadd.f32 %v7450, %v8026
  %v8028 = vpop.f32.mrb[0].mxu0
  %8029 = vmatprep.mubr.f32.mxu0 0.0
  %8030 = vmatmul.mubr.f32.gmra.mrb[0].mxu0 %v7738
  %v8031 = vpop.f32.mrb[0].mxu0
  %v8032 = vadd.f32 %v7455, %v8031
  %v8033 = vpop.f32.mrb[0].mxu0
  %8034 = vmatprep.mubr.f32.mxu0 0.0
  %8035 = vmatmul.mubr.f32.gmra.mrb[0].mxu0 %v7741
  %v8036 = vpop.f32.mrb[0].mxu0
  %v8037 = vadd.f32 %v7460, %v8036
  %v8038 = vpop.f32.mrb[0].mxu0
  %8039 = vmatprep.mubr.f32.mxu0 0.0
  %8040 = vmatmul.mubr.f32.gmra.mrb[0].mxu0 %v7744
  %v8041 = vpop.f32.mrb[0].mxu0
  %v8042 = vadd.f32 %v7465, %v8041
  %v8043 = vpop.f32.mrb[0].mxu0
  %8044 = vmatprep.mubr.f32.mxu0 0.0
  %8045 = vmatmul.mubr.f32.gmra.mrb[0].mxu0 %v7747
  %v8046 = vpop.f32.mrb[0].mxu0
  %v8047 = vadd.f32 %v7470, %v8046
  %v8048 = vpop.f32.mrb[0].mxu0
  %8049 = vmatprep.mubr.f32.mxu0 0.0
  %8050 = vmatmul.mubr.f32.gmra.mrb[0].mxu0 %v7750
  %v8051 = vpop.f32.mrb[0].mxu0
  %v8052 = vadd.f32 %v7475, %v8051
  %v8053 = vpop.f32.mrb[0].mxu0
  %8054 = vmatprep.mubr.f32.mxu0 0.0
  %8055 = vmatmul.mubr.f32.gmra.mrb[0].mxu0 %v7753
  %v8056 = vpop.f32.mrb[0].mxu0
  %v8057 = vadd.f32 %v7480, %v8056
  %v8058 = vpop.f32.mrb[0].mxu0
  %8059 = vmatprep.mubr.f32.mxu0 0.0
  %8060 = vmatmul.mubr.f32.gmra.mrb[0].mxu0 %v7756
  %v8061 = vpop.f32.mrb[0].mxu0
  %v8062 = vadd.f32 %v7485, %v8061
  %v8063 = vpop.f32.mrb[0].mxu0
  %8064 = vmatprep.mubr.f32.mxu0 0.0
  %8065 = vmatmul.mubr.f32.gmra.mrb[0].mxu0 %v7759
  %v8066 = vpop.f32.mrb[0].mxu0
  %v8067 = vadd.f32 %v7490, %v8066
  %v8068 = vpop.f32.mrb[0].mxu0
  %8069 = vmatprep.mubr.f32.mxu0 0.0
  %8070 = vmatmul.mubr.f32.gmra.mrb[0].mxu0 %v7762
  %v8071 = vpop.f32.mrb[0].mxu0
  %v8072 = vadd.f32 %v7495, %v8071
  %v8073 = vpop.f32.mrb[0].mxu0
  %8074 = vmatprep.mubr.f32.mxu0 0.0
  %8075 = vmatmul.mubr.f32.gmra.mrb[0].mxu0 %v7765
  %v8076 = vpop.f32.mrb[0].mxu0
  %v8077 = vadd.f32 %v7500, %v8076
  %v8078 = vpop.f32.mrb[0].mxu0
  %8079 = vmatprep.mubr.f32.mxu0 0.0
  %8080 = vmatmul.mubr.f32.gmra.mrb[0].mxu0 %v7768
  %v8081 = vpop.f32.mrb[0].mxu0
  %v8082 = vadd.f32 %v7505, %v8081
  %v8083 = vpop.f32.mrb[0].mxu0
  %8084 = vmatprep.mubr.f32.mxu0 0.0
  %8085 = vmatmul.mubr.f32.gmra.mrb[0].mxu0 %v7771
  %v8086 = vpop.f32.mrb[0].mxu0
  %v8087 = vadd.f32 %v7510, %v8086
  %v8088 = vpop.f32.mrb[0].mxu0
  %8089 = vmatprep.mubr.f32.mxu0 0.0
  %8090 = vmatmul.mubr.f32.gmra.mrb[0].mxu0 %v7774
  %v8091 = vpop.f32.mrb[0].mxu0
  %v8092 = vadd.f32 %v7515, %v8091
  %v8093 = vpop.f32.mrb[0].mxu0
  %8094 = vmatprep.mubr.f32.mxu0 0.0
  %8095 = vmatmul.mubr.f32.gmra.mrb[0].mxu0 %v7777
  %v8096 = vpop.f32.mrb[0].mxu0
  %v8097 = vadd.f32 %v7520, %v8096
  %v8098 = vpop.f32.mrb[0].mxu0
  %8099 = vmatprep.mubr.f32.mxu0 0.0
  %8100 = vmatmul.mubr.f32.gmra.mrb[0].mxu0 %v7780
  %v8101 = vpop.f32.mrb[0].mxu0
  %v8102 = vadd.f32 %v7525, %v8101
  %v8103 = vpop.f32.mrb[0].mxu0
  %8104 = vmatprep.mubr.f32.mxu0 0.0
  %8105 = vmatmul.mubr.f32.gmra.mrb[0].mxu0 %v7783
  %v8106 = vpop.f32.mrb[0].mxu0
  %v8107 = vadd.f32 %v7530, %v8106
  %v8108 = vpop.f32.mrb[0].mxu0
  %8109 = vmatprep.mubr.f32.mxu0 0.0
  %8110 = vmatmul.mubr.f32.gmra.mrb[0].mxu0 %v7786
  %v8111 = vpop.f32.mrb[0].mxu0
  %v8112 = vadd.f32 %v7535, %v8111
  %v8113 = vpop.f32.mrb[0].mxu0
  %8114 = vmatprep.mubr.f32.mxu0 0.0
  %8115 = vmatmul.mubr.f32.gmra.mrb[0].mxu0 %v7789
  %v8116 = vpop.f32.mrb[0].mxu0
  %v8117 = vadd.f32 %v7540, %v8116
  %v8118 = vpop.f32.mrb[0].mxu0
  %8119 = vmatprep.mubr.f32.mxu0 0.0
  %8120 = vmatmul.mubr.f32.gmra.mrb[0].mxu0 %v7792
  %v8121 = vpop.f32.mrb[0].mxu0
  %v8122 = vadd.f32 %v7545, %v8121
  %v8123 = vpop.f32.mrb[0].mxu0
  %8124 = vmatprep.mubr.f32.mxu0 0.0
  %8125 = vmatmul.mubr.f32.gmra.mrb[0].mxu0 %v7795
  %v8126 = vpop.f32.mrb[0].mxu0
  %v8127 = vadd.f32 %v7550, %v8126
  %v8128 = vpop.f32.mrb[0].mxu0
  %8129 = vmatprep.mubr.f32.mxu0 0.0
  %8130 = vmatmul.mubr.f32.gmra.mrb[0].mxu0 %v7798
  %v8131 = vpop.f32.mrb[0].mxu0
  %v8132 = vadd.f32 %v7555, %v8131
  %v8133 = vpop.f32.mrb[0].mxu0
  %8134 = vmatprep.mubr.f32.mxu0 0.0
  %8135 = vmatmul.mubr.f32.gmra.mrb[0].mxu0 %v7801
  %v8136 = vpop.f32.mrb[0].mxu0
  %v8137 = vadd.f32 %v7560, %v8136
  %v8138 = vpop.f32.mrb[0].mxu0
  %8139 = vmatprep.mubr.f32.mxu0 0.0
  %8140 = vmatmul.mubr.f32.gmra.mrb[0].mxu0 %v7804
  %v8141 = vpop.f32.mrb[0].mxu0
  %v8142 = vadd.f32 %v7565, %v8141
  %v8143 = vpop.f32.mrb[0].mxu0
  %8144 = vmatprep.mubr.f32.mxu0 0.0
  %8145 = vmatmul.mubr.f32.gmra.mrb[0].mxu0 %v7807
  %v8146 = vpop.f32.mrb[0].mxu0
  %v8147 = vadd.f32 %v7570, %v8146
  %v8148 = vpop.f32.mrb[0].mxu0
  %8149 = vmatprep.mubr.f32.mxu0 0.0
  %8150 = vmatmul.mubr.f32.gmra.mrb[0].mxu0 %v7810
  %v8151 = vpop.f32.mrb[0].mxu0
  %v8152 = vadd.f32 %v7575, %v8151
  %v8153 = vpop.f32.mrb[0].mxu0
  %8154 = vmatprep.mubr.f32.mxu0 0.0
  %8155 = vmatmul.mubr.f32.gmra.mrb[0].mxu0 %v7813
  %v8156 = vpop.f32.mrb[0].mxu0
  %v8157 = vadd.f32 %v7580, %v8156
  %v8158 = vpop.f32.mrb[0].mxu0
  %8159 = vmatprep.mubr.f32.mxu0 0.0
  %8160 = vmatmul.mubr.f32.gmra.mrb[0].mxu0 %v7816
  %v8161 = vpop.f32.mrb[0].mxu0
  %v8162 = vadd.f32 %v7585, %v8161
  %v8163 = vpop.f32.mrb[0].mxu0
  %8164 = vmatprep.mubr.f32.mxu0 0.0
  %8165 = vmatmul.mubr.f32.gmra.mrb[0].mxu0 %v7819
  %v8166 = vpop.f32.mrb[0].mxu0
  %v8167 = vadd.f32 %v7590, %v8166
  %v8168 = vpop.f32.mrb[0].mxu0
  %8169 = vmatprep.mubr.f32.mxu0 0.0
  %8170 = vmatmul.mubr.f32.gmra.mrb[0].mxu0 %v7822
  %v8171 = vpop.f32.mrb[0].mxu0
  %v8172 = vadd.f32 %v7595, %v8171
  %v8173 = vpop.f32.mrb[0].mxu0
  %8174 = vmatprep.mubr.f32.mxu0 0.0
  %8175 = vmatmul.mubr.f32.gmra.mrb[0].mxu0 %v7825
  %v8176 = vpop.f32.mrb[0].mxu0
  %v8177 = vadd.f32 %v7600, %v8176
  %v8178 = vpop.f32.mrb[0].mxu0
  %8179 = vmatprep.mubr.f32.mxu0 0.0
  %8180 = vmatmul.mubr.f32.gmra.mrb[0].mxu0 %v7828
  %v8181 = vpop.f32.mrb[0].mxu0
  %v8182 = vadd.f32 %v7605, %v8181
  %v8183 = vpop.f32.mrb[0].mxu0
  %8184 = vmatprep.mubr.f32.mxu0 0.0
  %8185 = vmatmul.mubr.f32.gmra.mrb[0].mxu0 %v7831
  %v8186 = vpop.f32.mrb[0].mxu0
  %v8187 = vadd.f32 %v7610, %v8186
  %v8188 = vpop.f32.mrb[0].mxu0
  %8189 = vmatprep.mubr.f32.mxu0 0.0
  %8190 = vmatmul.mubr.f32.gmra.mrb[0].mxu0 %v7834
  %v8191 = vpop.f32.mrb[0].mxu0
  %v8192 = vadd.f32 %v7615, %v8191
  %v8193 = vpop.f32.mrb[0].mxu0
  %8194 = vmatprep.mubr.f32.mxu0 0.0
  %8195 = vmatmul.mubr.f32.gmra.mrb[0].mxu0 %v7837
  %v8196 = vpop.f32.mrb[0].mxu0
  %v8197 = vadd.f32 %v7620, %v8196
  %v8198 = vpop.f32.mrb[0].mxu0
  %8199 = vmatprep.mubr.f32.mxu0 0.0
  %8200 = vmatmul.mubr.f32.gmra.mrb[0].mxu0 %v7840
  %v8201 = vpop.f32.mrb[0].mxu0
  %v8202 = vadd.f32 %v7625, %v8201
  %v8203 = vpop.f32.mrb[0].mxu0
  %8204 = vmatprep.mubr.f32.mxu0 0.0
  %8205 = vmatmul.mubr.f32.gmra.mrb[0].mxu0 %v7843
  %v8206 = vpop.f32.mrb[0].mxu0
  %v8207 = vadd.f32 %v7630, %v8206
  %v8208 = vpop.f32.mrb[0].mxu0
  %8209 = vmatprep.mubr.f32.mxu0 0.0
  %8210 = vmatmul.mubr.f32.gmra.mrb[0].mxu0 %v7846
  %v8211 = vpop.f32.mrb[0].mxu0
  %v8212 = vadd.f32 %v7635, %v8211
  %v8213 = vpop.f32.mrb[0].mxu0
  %8214 = vmatprep.mubr.f32.mxu0 0.0
  %8215 = vmatmul.mubr.f32.gmra.mrb[0].mxu0 %v7849
  %v8216 = vpop.f32.mrb[0].mxu0
  %v8217 = vadd.f32 %v7640, %v8216
  %v8218 = vpop.f32.mrb[0].mxu0
  %8219 = vmatprep.mubr.f32.mxu0 0.0
  %8220 = vmatmul.mubr.f32.gmra.mrb[0].mxu0 %v7852
  %v8221 = vpop.f32.mrb[0].mxu0
  %v8222 = vadd.f32 %v7645, %v8221
  %v8223 = vpop.f32.mrb[0].mxu0
  %8224 = vmatprep.mubr.f32.mxu0 0.0
  %8225 = vmatmul.mubr.f32.gmra.mrb[0].mxu0 %v7855
  %v8226 = vpop.f32.mrb[0].mxu0
  %v8227 = vadd.f32 %v7650, %v8226
  %v8228 = vpop.f32.mrb[0].mxu0
  %8229 = vmatprep.mubr.f32.mxu0 0.0
  %8230 = vmatmul.mubr.f32.gmra.mrb[0].mxu0 %v7858
  %v8231 = vpop.f32.mrb[0].mxu0
  %v8232 = vadd.f32 %v7655, %v8231
  %v8233 = vpop.f32.mrb[0].mxu0
  %8234 = vmatprep.mubr.f32.mxu0 0.0
  %8235 = vmatmul.mubr.f32.gmra.mrb[0].mxu0 %v7861
  %v8236 = vpop.f32.mrb[0].mxu0
  %v8237 = vadd.f32 %v7660, %v8236
  %v8238 = vpop.f32.mrb[0].mxu0
  %8239 = vmatprep.mubr.f32.mxu0 0.0
  %8240 = vmatmul.mubr.f32.gmra.mrb[0].mxu0 %v7864
  %v8241 = vpop.f32.mrb[0].mxu0
  %v8242 = vadd.f32 %v7665, %v8241
  %v8243 = vpop.f32.mrb[0].mxu0
  %8244 = vmatprep.mubr.f32.mxu0 0.0
  %8245 = vmatmul.mubr.f32.gmra.mrb[0].mxu0 %v7867
  %v8246 = vpop.f32.mrb[0].mxu0
  %v8247 = vadd.f32 %v7670, %v8246
  %v8248 = vpop.f32.mrb[0].mxu0
  %8249 = vmatprep.mubr.f32.mxu0 0.0
  %8250 = vmatmul.mubr.f32.gmra.mrb[0].mxu0 %v7870
  %v8251 = vpop.f32.mrb[0].mxu0
  %v8252 = vadd.f32 %v7675, %v8251
  %v8253 = vpop.f32.mrb[0].mxu0
  %8254 = vmatprep.mubr.f32.mxu0 0.0
  %8255 = vmatmul.mubr.f32.gmra.mrb[0].mxu0 %v7873
  %v8256 = vpop.f32.mrb[0].mxu0
  %v8257 = vadd.f32 %v7680, %v8256
  %v8258 = vpop.f32.mrb[0].mxu0
  %8259 = vdwg.mxu0
  %v8260 = vld [vmem:[#allocation2 + $0x2] sm:$0xff]
  %v8261 = vld [vmem:[#allocation2 + $0xa] sm:$0xff]
  %v8262 = vld [vmem:[#allocation2 + $0x1a] sm:$0xff]
  %v8263 = vld [vmem:[#allocation2 + $0x22] sm:$0xff]
  %v8264 = vld [vmem:[#allocation2 + $0x32] sm:$0xff]
  %v8265 = vld [vmem:[#allocation2 + $0x3a] sm:$0xff]
  %v8266 = vld [vmem:[#allocation2 + $0x4a] sm:$0xff]
  %v8267 = vld [vmem:[#allocation2 + $0x52] sm:$0xff]
  %v8268 = vld [vmem:[#allocation2 + $0x62] sm:$0xff]
  %v8269 = vld [vmem:[#allocation2 + $0x6a] sm:$0xff]
  %v8270 = vld [vmem:[#allocation2 + $0x7a] sm:$0xff]
  %v8271 = vld [vmem:[#allocation2 + $0x82] sm:$0xff]
  %v8272 = vld [vmem:[#allocation2 + $0x92] sm:$0xff]
  %v8273 = vld [vmem:[#allocation2 + $0x9a] sm:$0xff]
  %v8274 = vld [vmem:[#allocation2 + $0xaa] sm:$0xff]
  %v8275 = vld [vmem:[#allocation2 + $0xb2] sm:$0xff]
  %v8276 = vld [vmem:[#allocation2 + $0xc2] sm:$0xff]
  %v8277 = vld [vmem:[#allocation2 + $0xca] sm:$0xff]
  %v8278 = vld [vmem:[#allocation2 + $0xda] sm:$0xff]
  %v8279 = vld [vmem:[#allocation2 + $0xe2] sm:$0xff]
  %v8280 = vld [vmem:[#allocation2 + $0xf2] sm:$0xff]
  %v8281 = vld [vmem:[#allocation2 + $0xfa] sm:$0xff]
  %v8282 = vld [vmem:[#allocation2 + $0x10a] sm:$0xff]
  %v8283 = vld [vmem:[#allocation2 + $0x112] sm:$0xff]
  %v8284 = vld [vmem:[#allocation2 + $0x122] sm:$0xff]
  %v8285 = vld [vmem:[#allocation2 + $0x12a] sm:$0xff]
  %v8286 = vld [vmem:[#allocation2 + $0x13a] sm:$0xff]
  %v8287 = vld [vmem:[#allocation2 + $0x142] sm:$0xff]
  %v8288 = vld [vmem:[#allocation2 + $0x152] sm:$0xff]
  %v8289 = vld [vmem:[#allocation2 + $0x15a] sm:$0xff]
  %v8290 = vld [vmem:[#allocation2 + $0x16a] sm:$0xff]
  %v8291 = vld [vmem:[#allocation2 + $0x172] sm:$0xff]
  %v8292 = vld [vmem:[#allocation2 + $0x1b2] sm:$0xff]
  %v8293 = vld [vmem:[#allocation2 + $0x1ba] sm:$0xff]
  %v8294 = vld [vmem:[#allocation2 + $0x1ca] sm:$0xff]
  %v8295 = vld [vmem:[#allocation2 + $0x1d2] sm:$0xff]
  %v8296 = vld [vmem:[#allocation2 + $0x1e2] sm:$0xff]
  %v8297 = vld [vmem:[#allocation2 + $0x1ea] sm:$0xff]
  %v8298 = vld [vmem:[#allocation2 + $0x1fa] sm:$0xff]
  %v8299 = vld [vmem:[#allocation2 + $0x202] sm:$0xff]
  %v8300 = vld [vmem:[#allocation2 + $0x212] sm:$0xff]
  %v8301 = vld [vmem:[#allocation2 + $0x21a] sm:$0xff]
  %v8302 = vld [vmem:[#allocation2 + $0x22a] sm:$0xff]
  %v8303 = vld [vmem:[#allocation2 + $0x232] sm:$0xff]
  %v8304 = vld [vmem:[#allocation2 + $0x242] sm:$0xff]
  %v8305 = vld [vmem:[#allocation2 + $0x24a] sm:$0xff]
  %v8306 = vld [vmem:[#allocation2 + $0x25a] sm:$0xff]
  %v8307 = vld [vmem:[#allocation2 + $0x262] sm:$0xff]
  %v8308 = vld [vmem:[#allocation2 + $0x272] sm:$0xff]
  %v8309 = vld [vmem:[#allocation2 + $0x27a] sm:$0xff]
  %v8310 = vld [vmem:[#allocation2 + $0x28a] sm:$0xff]
  %v8311 = vld [vmem:[#allocation2 + $0x292] sm:$0xff]
  %v8312 = vld [vmem:[#allocation2 + $0x2a2] sm:$0xff]
  %v8313 = vld [vmem:[#allocation2 + $0x2aa] sm:$0xff]
  %v8314 = vld [vmem:[#allocation2 + $0x2ba] sm:$0xff]
  %v8315 = vld [vmem:[#allocation2 + $0x2c2] sm:$0xff]
  %v8316 = vld [vmem:[#allocation2 + $0x2d2] sm:$0xff]
  %v8317 = vld [vmem:[#allocation2 + $0x2da] sm:$0xff]
  %v8318 = vld [vmem:[#allocation2 + $0x2ea] sm:$0xff]
  %v8319 = vld [vmem:[#allocation2 + $0x2f2] sm:$0xff]
  %v8320 = vld [vmem:[#allocation2 + $0x302] sm:$0xff]
  %v8321 = vld [vmem:[#allocation2 + $0x30a] sm:$0xff]
  %v8322 = vld [vmem:[#allocation2 + $0x31a] sm:$0xff]
  %v8323 = vld [vmem:[#allocation2 + $0x322] sm:$0xff]
  %v8324 = vld [vmem:[%s2 + $0x10] sm:$0xff]
  %v8326 = vsel %vm28, %v8260, 0
  %v8329 = vsel %vm28, %v8261, 0
  %v8332 = vsel %vm28, %v8262, 0
  %v8335 = vsel %vm28, %v8263, 0
  %v8338 = vsel %vm28, %v8264, 0
  %v8341 = vsel %vm28, %v8265, 0
  %v8344 = vsel %vm28, %v8266, 0
  %v8347 = vsel %vm28, %v8267, 0
  %v8350 = vsel %vm28, %v8268, 0
  %v8353 = vsel %vm28, %v8269, 0
  %v8356 = vsel %vm28, %v8270, 0
  %v8359 = vsel %vm28, %v8271, 0
  %v8362 = vsel %vm28, %v8272, 0
  %v8365 = vsel %vm28, %v8273, 0
  %v8368 = vsel %vm28, %v8274, 0
  %v8371 = vsel %vm28, %v8275, 0
  %v8374 = vsel %vm28, %v8276, 0
  %v8377 = vsel %vm28, %v8277, 0
  %v8380 = vsel %vm28, %v8278, 0
  %v8383 = vsel %vm28, %v8279, 0
  %v8386 = vsel %vm28, %v8280, 0
  %v8389 = vsel %vm28, %v8281, 0
  %v8392 = vsel %vm28, %v8282, 0
  %v8395 = vsel %vm28, %v8283, 0
  %v8398 = vsel %vm28, %v8284, 0
  %v8401 = vsel %vm28, %v8285, 0
  %v8404 = vsel %vm28, %v8286, 0
  %v8407 = vsel %vm28, %v8287, 0
  %v8410 = vsel %vm28, %v8288, 0
  %v8413 = vsel %vm28, %v8289, 0
  %v8416 = vsel %vm28, %v8290, 0
  %v8419 = vsel %vm28, %v8291, 0
  %v8422 = vsel %vm28, %v8292, 0
  %v8425 = vsel %vm28, %v8293, 0
  %v8428 = vsel %vm28, %v8294, 0
  %v8431 = vsel %vm28, %v8295, 0
  %v8434 = vsel %vm28, %v8296, 0
  %v8437 = vsel %vm28, %v8297, 0
  %v8440 = vsel %vm28, %v8298, 0
  %v8443 = vsel %vm28, %v8299, 0
  %v8446 = vsel %vm28, %v8300, 0
  %v8449 = vsel %vm28, %v8301, 0
  %v8452 = vsel %vm28, %v8302, 0
  %v8455 = vsel %vm28, %v8303, 0
  %v8458 = vsel %vm28, %v8304, 0
  %v8461 = vsel %vm28, %v8305, 0
  %v8464 = vsel %vm28, %v8306, 0
  %v8467 = vsel %vm28, %v8307, 0
  %v8470 = vsel %vm28, %v8308, 0
  %v8473 = vsel %vm28, %v8309, 0
  %v8476 = vsel %vm28, %v8310, 0
  %v8479 = vsel %vm28, %v8311, 0
  %v8482 = vsel %vm28, %v8312, 0
  %v8485 = vsel %vm28, %v8313, 0
  %v8488 = vsel %vm28, %v8314, 0
  %v8491 = vsel %vm28, %v8315, 0
  %v8494 = vsel %vm28, %v8316, 0
  %v8497 = vsel %vm28, %v8317, 0
  %v8500 = vsel %vm28, %v8318, 0
  %v8503 = vsel %vm28, %v8319, 0
  %v8506 = vsel %vm28, %v8320, 0
  %v8509 = vsel %vm28, %v8321, 0
  %v8512 = vsel %vm28, %v8322, 0
  %v8515 = vsel %vm28, %v8323, 0
  %8517 = vmatprep.subr.mxu0 0.0
  %8518 = vmatpush1.msra.mxu0 %v8324
  %8519 = vmatprep.subr.mxu0 0.0
  %8520 = vmatpush1.msra.mxu0 0.0
  %8521 = vmatprep.subr.mxu0 0.0
  %8522 = vmatpush1.msra.mxu0 0.0
  %8523 = vmatprep.subr.mxu0 0.0
  %8524 = vmatpush1.msra.mxu0 0.0
  %8525 = vmatprep.subr.mxu0 0.0
  %8526 = vmatpush1.msra.mxu0 0.0
  %8527 = vmatprep.subr.mxu0 0.0
  %8528 = vmatpush1.msra.mxu0 0.0
  %8529 = vmatprep.subr.mxu0 0.0
  %8530 = vmatpush1.msra.mxu0 0.0
  %8531 = vmatprep.subr.mxu0 0.0
  %8532 = vmatpush1.msra.mxu0 0.0
  %8533 = vmatprep.subr.mxu0 0.0
  %8534 = vmatpush1.msra.mxu0 0.0
  %8535 = vmatprep.subr.mxu0 0.0
  %8536 = vmatpush1.msra.mxu0 0.0
  %8537 = vmatprep.subr.mxu0 0.0
  %8538 = vmatpush1.msra.mxu0 0.0
  %8539 = vmatprep.subr.mxu0 0.0
  %8540 = vmatpush1.msra.mxu0 0.0
  %8541 = vmatprep.subr.mxu0 0.0
  %8542 = vmatpush1.msra.mxu0 0.0
  %8543 = vmatprep.subr.mxu0 0.0
  %8544 = vmatpush1.msra.mxu0 0.0
  %8545 = vmatprep.subr.mxu0 0.0
  %8546 = vmatpush1.msra.mxu0 0.0
  %8547 = vmatprep.subr.mxu0 0.0
  %8548 = vmatpush1.msra.mxu0 0.0
  %8549 = vmatprep.subr.mxu0 0.0
  %8550 = vmatpush1.msra.mxu0 0.0
  %8551 = vmatprep.subr.mxu0 0.0
  %8552 = vmatpush1.msra.mxu0 0.0
  %8553 = vmatprep.subr.mxu0 0.0
  %8554 = vmatpush1.msra.mxu0 0.0
  %8555 = vmatprep.subr.mxu0 0.0
  %8556 = vmatpush1.msra.mxu0 0.0
  %8557 = vmatprep.subr.mxu0 0.0
  %8558 = vmatpush1.msra.mxu0 0.0
  %8559 = vmatprep.subr.mxu0 0.0
  %8560 = vmatpush1.msra.mxu0 0.0
  %8561 = vmatprep.subr.mxu0 0.0
  %8562 = vmatpush1.msra.mxu0 0.0
  %8563 = vmatprep.subr.mxu0 0.0
  %8564 = vmatpush1.msra.mxu0 0.0
  %8565 = vmatprep.subr.mxu0 0.0
  %8566 = vmatpush1.msra.mxu0 0.0
  %8567 = vmatprep.subr.mxu0 0.0
  %8568 = vmatpush1.msra.mxu0 0.0
  %8569 = vmatprep.subr.mxu0 0.0
  %8570 = vmatpush1.msra.mxu0 0.0
  %8571 = vmatprep.subr.mxu0 0.0
  %8572 = vmatpush1.msra.mxu0 0.0
  %8573 = vmatprep.subr.mxu0 0.0
  %8574 = vmatpush1.msra.mxu0 0.0
  %8575 = vmatprep.subr.mxu0 0.0
  %8576 = vmatpush1.msra.mxu0 0.0
  %8577 = vmatprep.subr.mxu0 0.0
  %8578 = vmatpush1.msra.mxu0 0.0
  %8579 = vmatprep.subr.mxu0 0.0
  %8580 = vmatpush1.msra.mxu0 0.0
  %8581 = vmatprep.mubr.f32.mxu0 0.0
  %8582 = vmatmul.mubr.f32.gmra.mrb[0].mxu0 %v8326
  %v8583 = vpop.f32.mrb[0].mxu0
  %v8584 = vadd.f32 0.0, %v8583
  %v8585 = vpop.f32.mrb[0].mxu0
  %8586 = vmatprep.mubr.f32.mxu0 0.0
  %8587 = vmatmul.mubr.f32.gmra.mrb[0].mxu0 %v8329
  %v8588 = vpop.f32.mrb[0].mxu0
  %v8589 = vadd.f32 0.0, %v8588
  %v8590 = vpop.f32.mrb[0].mxu0
  %8591 = vmatprep.mubr.f32.mxu0 0.0
  %8592 = vmatmul.mubr.f32.gmra.mrb[0].mxu0 %v8332
  %v8593 = vpop.f32.mrb[0].mxu0
  %v8594 = vadd.f32 0.0, %v8593
  %v8595 = vpop.f32.mrb[0].mxu0
  %8596 = vmatprep.mubr.f32.mxu0 0.0
  %8597 = vmatmul.mubr.f32.gmra.mrb[0].mxu0 %v8335
  %v8598 = vpop.f32.mrb[0].mxu0
  %v8599 = vadd.f32 0.0, %v8598
  %v8600 = vpop.f32.mrb[0].mxu0
  %8601 = vmatprep.mubr.f32.mxu0 0.0
  %8602 = vmatmul.mubr.f32.gmra.mrb[0].mxu0 %v8338
  %v8603 = vpop.f32.mrb[0].mxu0
  %v8604 = vadd.f32 0.0, %v8603
  %v8605 = vpop.f32.mrb[0].mxu0
  %8606 = vmatprep.mubr.f32.mxu0 0.0
  %8607 = vmatmul.mubr.f32.gmra.mrb[0].mxu0 %v8341
  %v8608 = vpop.f32.mrb[0].mxu0
  %v8609 = vadd.f32 0.0, %v8608
  %v8610 = vpop.f32.mrb[0].mxu0
  %8611 = vmatprep.mubr.f32.mxu0 0.0
  %8612 = vmatmul.mubr.f32.gmra.mrb[0].mxu0 %v8344
  %v8613 = vpop.f32.mrb[0].mxu0
  %v8614 = vadd.f32 0.0, %v8613
  %v8615 = vpop.f32.mrb[0].mxu0
  %8616 = vmatprep.mubr.f32.mxu0 0.0
  %8617 = vmatmul.mubr.f32.gmra.mrb[0].mxu0 %v8347
  %v8618 = vpop.f32.mrb[0].mxu0
  %v8619 = vadd.f32 0.0, %v8618
  %v8620 = vpop.f32.mrb[0].mxu0
  %8621 = vmatprep.mubr.f32.mxu0 0.0
  %8622 = vmatmul.mubr.f32.gmra.mrb[0].mxu0 %v8350
  %v8623 = vpop.f32.mrb[0].mxu0
  %v8624 = vadd.f32 0.0, %v8623
  %v8625 = vpop.f32.mrb[0].mxu0
  %8626 = vmatprep.mubr.f32.mxu0 0.0
  %8627 = vmatmul.mubr.f32.gmra.mrb[0].mxu0 %v8353
  %v8628 = vpop.f32.mrb[0].mxu0
  %v8629 = vadd.f32 0.0, %v8628
  %v8630 = vpop.f32.mrb[0].mxu0
  %8631 = vmatprep.mubr.f32.mxu0 0.0
  %8632 = vmatmul.mubr.f32.gmra.mrb[0].mxu0 %v8356
  %v8633 = vpop.f32.mrb[0].mxu0
  %v8634 = vadd.f32 0.0, %v8633
  %v8635 = vpop.f32.mrb[0].mxu0
  %8636 = vmatprep.mubr.f32.mxu0 0.0
  %8637 = vmatmul.mubr.f32.gmra.mrb[0].mxu0 %v8359
  %v8638 = vpop.f32.mrb[0].mxu0
  %v8639 = vadd.f32 0.0, %v8638
  %v8640 = vpop.f32.mrb[0].mxu0
  %8641 = vmatprep.mubr.f32.mxu0 0.0
  %8642 = vmatmul.mubr.f32.gmra.mrb[0].mxu0 %v8362
  %v8643 = vpop.f32.mrb[0].mxu0
  %v8644 = vadd.f32 0.0, %v8643
  %v8645 = vpop.f32.mrb[0].mxu0
  %8646 = vmatprep.mubr.f32.mxu0 0.0
  %8647 = vmatmul.mubr.f32.gmra.mrb[0].mxu0 %v8365
  %v8648 = vpop.f32.mrb[0].mxu0
  %v8649 = vadd.f32 0.0, %v8648
  %v8650 = vpop.f32.mrb[0].mxu0
  %8651 = vmatprep.mubr.f32.mxu0 0.0
  %8652 = vmatmul.mubr.f32.gmra.mrb[0].mxu0 %v8368
  %v8653 = vpop.f32.mrb[0].mxu0
  %v8654 = vadd.f32 0.0, %v8653
  %v8655 = vpop.f32.mrb[0].mxu0
  %8656 = vmatprep.mubr.f32.mxu0 0.0
  %8657 = vmatmul.mubr.f32.gmra.mrb[0].mxu0 %v8371
  %v8658 = vpop.f32.mrb[0].mxu0
  %v8659 = vadd.f32 0.0, %v8658
  %v8660 = vpop.f32.mrb[0].mxu0
  %8661 = vmatprep.mubr.f32.mxu0 0.0
  %8662 = vmatmul.mubr.f32.gmra.mrb[0].mxu0 %v8374
  %v8663 = vpop.f32.mrb[0].mxu0
  %v8664 = vadd.f32 0.0, %v8663
  %v8665 = vpop.f32.mrb[0].mxu0
  %8666 = vmatprep.mubr.f32.mxu0 0.0
  %8667 = vmatmul.mubr.f32.gmra.mrb[0].mxu0 %v8377
  %v8668 = vpop.f32.mrb[0].mxu0
  %v8669 = vadd.f32 0.0, %v8668
  %v8670 = vpop.f32.mrb[0].mxu0
  %8671 = vmatprep.mubr.f32.mxu0 0.0
  %8672 = vmatmul.mubr.f32.gmra.mrb[0].mxu0 %v8380
  %v8673 = vpop.f32.mrb[0].mxu0
  %v8674 = vadd.f32 0.0, %v8673
  %v8675 = vpop.f32.mrb[0].mxu0
  %8676 = vmatprep.mubr.f32.mxu0 0.0
  %8677 = vmatmul.mubr.f32.gmra.mrb[0].mxu0 %v8383
  %v8678 = vpop.f32.mrb[0].mxu0
  %v8679 = vadd.f32 0.0, %v8678
  %v8680 = vpop.f32.mrb[0].mxu0
  %8681 = vmatprep.mubr.f32.mxu0 0.0
  %8682 = vmatmul.mubr.f32.gmra.mrb[0].mxu0 %v8386
  %v8683 = vpop.f32.mrb[0].mxu0
  %v8684 = vadd.f32 0.0, %v8683
  %v8685 = vpop.f32.mrb[0].mxu0
  %8686 = vmatprep.mubr.f32.mxu0 0.0
  %8687 = vmatmul.mubr.f32.gmra.mrb[0].mxu0 %v8389
  %v8688 = vpop.f32.mrb[0].mxu0
  %v8689 = vadd.f32 0.0, %v8688
  %v8690 = vpop.f32.mrb[0].mxu0
  %8691 = vmatprep.mubr.f32.mxu0 0.0
  %8692 = vmatmul.mubr.f32.gmra.mrb[0].mxu0 %v8392
  %v8693 = vpop.f32.mrb[0].mxu0
  %v8694 = vadd.f32 0.0, %v8693
  %v8695 = vpop.f32.mrb[0].mxu0
  %8696 = vmatprep.mubr.f32.mxu0 0.0
  %8697 = vmatmul.mubr.f32.gmra.mrb[0].mxu0 %v8395
  %v8698 = vpop.f32.mrb[0].mxu0
  %v8699 = vadd.f32 0.0, %v8698
  %v8700 = vpop.f32.mrb[0].mxu0
  %8701 = vmatprep.mubr.f32.mxu0 0.0
  %8702 = vmatmul.mubr.f32.gmra.mrb[0].mxu0 %v8398
  %v8703 = vpop.f32.mrb[0].mxu0
  %v8704 = vadd.f32 0.0, %v8703
  %v8705 = vpop.f32.mrb[0].mxu0
  %8706 = vmatprep.mubr.f32.mxu0 0.0
  %8707 = vmatmul.mubr.f32.gmra.mrb[0].mxu0 %v8401
  %v8708 = vpop.f32.mrb[0].mxu0
  %v8709 = vadd.f32 0.0, %v8708
  %v8710 = vpop.f32.mrb[0].mxu0
  %8711 = vmatprep.mubr.f32.mxu0 0.0
  %8712 = vmatmul.mubr.f32.gmra.mrb[0].mxu0 %v8404
  %v8713 = vpop.f32.mrb[0].mxu0
  %v8714 = vadd.f32 0.0, %v8713
  %v8715 = vpop.f32.mrb[0].mxu0
  %8716 = vmatprep.mubr.f32.mxu0 0.0
  %8717 = vmatmul.mubr.f32.gmra.mrb[0].mxu0 %v8407
  %v8718 = vpop.f32.mrb[0].mxu0
  %v8719 = vadd.f32 0.0, %v8718
  %v8720 = vpop.f32.mrb[0].mxu0
  %8721 = vmatprep.mubr.f32.mxu0 0.0
  %8722 = vmatmul.mubr.f32.gmra.mrb[0].mxu0 %v8410
  %v8723 = vpop.f32.mrb[0].mxu0
  %v8724 = vadd.f32 0.0, %v8723
  %v8725 = vpop.f32.mrb[0].mxu0
  %8726 = vmatprep.mubr.f32.mxu0 0.0
  %8727 = vmatmul.mubr.f32.gmra.mrb[0].mxu0 %v8413
  %v8728 = vpop.f32.mrb[0].mxu0
  %v8729 = vadd.f32 0.0, %v8728
  %v8730 = vpop.f32.mrb[0].mxu0
  %8731 = vmatprep.mubr.f32.mxu0 0.0
  %8732 = vmatmul.mubr.f32.gmra.mrb[0].mxu0 %v8416
  %v8733 = vpop.f32.mrb[0].mxu0
  %v8734 = vadd.f32 0.0, %v8733
  %v8735 = vpop.f32.mrb[0].mxu0
  %8736 = vmatprep.mubr.f32.mxu0 0.0
  %8737 = vmatmul.mubr.f32.gmra.mrb[0].mxu0 %v8419
  %v8738 = vpop.f32.mrb[0].mxu0
  %v8739 = vadd.f32 0.0, %v8738
  %v8740 = vpop.f32.mrb[0].mxu0
  %8741 = vmatprep.mubr.f32.mxu0 0.0
  %8742 = vmatmul.mubr.f32.gmra.mrb[0].mxu0 %v8422
  %v8743 = vpop.f32.mrb[0].mxu0
  %v8744 = vadd.f32 0.0, %v8743
  %v8745 = vpop.f32.mrb[0].mxu0
  %8746 = vmatprep.mubr.f32.mxu0 0.0
  %8747 = vmatmul.mubr.f32.gmra.mrb[0].mxu0 %v8425
  %v8748 = vpop.f32.mrb[0].mxu0
  %v8749 = vadd.f32 0.0, %v8748
  %v8750 = vpop.f32.mrb[0].mxu0
  %8751 = vmatprep.mubr.f32.mxu0 0.0
  %8752 = vmatmul.mubr.f32.gmra.mrb[0].mxu0 %v8428
  %v8753 = vpop.f32.mrb[0].mxu0
  %v8754 = vadd.f32 0.0, %v8753
  %v8755 = vpop.f32.mrb[0].mxu0
  %8756 = vmatprep.mubr.f32.mxu0 0.0
  %8757 = vmatmul.mubr.f32.gmra.mrb[0].mxu0 %v8431
  %v8758 = vpop.f32.mrb[0].mxu0
  %v8759 = vadd.f32 0.0, %v8758
  %v8760 = vpop.f32.mrb[0].mxu0
  %8761 = vmatprep.mubr.f32.mxu0 0.0
  %8762 = vmatmul.mubr.f32.gmra.mrb[0].mxu0 %v8434
  %v8763 = vpop.f32.mrb[0].mxu0
  %v8764 = vadd.f32 0.0, %v8763
  %v8765 = vpop.f32.mrb[0].mxu0
  %8766 = vmatprep.mubr.f32.mxu0 0.0
  %8767 = vmatmul.mubr.f32.gmra.mrb[0].mxu0 %v8437
  %v8768 = vpop.f32.mrb[0].mxu0
  %v8769 = vadd.f32 0.0, %v8768
  %v8770 = vpop.f32.mrb[0].mxu0
  %8771 = vmatprep.mubr.f32.mxu0 0.0
  %8772 = vmatmul.mubr.f32.gmra.mrb[0].mxu0 %v8440
  %v8773 = vpop.f32.mrb[0].mxu0
  %v8774 = vadd.f32 0.0, %v8773
  %v8775 = vpop.f32.mrb[0].mxu0
  %8776 = vmatprep.mubr.f32.mxu0 0.0
  %8777 = vmatmul.mubr.f32.gmra.mrb[0].mxu0 %v8443
  %v8778 = vpop.f32.mrb[0].mxu0
  %v8779 = vadd.f32 0.0, %v8778
  %v8780 = vpop.f32.mrb[0].mxu0
  %8781 = vmatprep.mubr.f32.mxu0 0.0
  %8782 = vmatmul.mubr.f32.gmra.mrb[0].mxu0 %v8446
  %v8783 = vpop.f32.mrb[0].mxu0
  %v8784 = vadd.f32 0.0, %v8783
  %v8785 = vpop.f32.mrb[0].mxu0
  %8786 = vmatprep.mubr.f32.mxu0 0.0
  %8787 = vmatmul.mubr.f32.gmra.mrb[0].mxu0 %v8449
  %v8788 = vpop.f32.mrb[0].mxu0
  %v8789 = vadd.f32 0.0, %v8788
  %v8790 = vpop.f32.mrb[0].mxu0
  %8791 = vmatprep.mubr.f32.mxu0 0.0
  %8792 = vmatmul.mubr.f32.gmra.mrb[0].mxu0 %v8452
  %v8793 = vpop.f32.mrb[0].mxu0
  %v8794 = vadd.f32 0.0, %v8793
  %v8795 = vpop.f32.mrb[0].mxu0
  %8796 = vmatprep.mubr.f32.mxu0 0.0
  %8797 = vmatmul.mubr.f32.gmra.mrb[0].mxu0 %v8455
  %v8798 = vpop.f32.mrb[0].mxu0
  %v8799 = vadd.f32 0.0, %v8798
  %v8800 = vpop.f32.mrb[0].mxu0
  %8801 = vmatprep.mubr.f32.mxu0 0.0
  %8802 = vmatmul.mubr.f32.gmra.mrb[0].mxu0 %v8458
  %v8803 = vpop.f32.mrb[0].mxu0
  %v8804 = vadd.f32 0.0, %v8803
  %v8805 = vpop.f32.mrb[0].mxu0
  %8806 = vmatprep.mubr.f32.mxu0 0.0
  %8807 = vmatmul.mubr.f32.gmra.mrb[0].mxu0 %v8461
  %v8808 = vpop.f32.mrb[0].mxu0
  %v8809 = vadd.f32 0.0, %v8808
  %v8810 = vpop.f32.mrb[0].mxu0
  %8811 = vmatprep.mubr.f32.mxu0 0.0
  %8812 = vmatmul.mubr.f32.gmra.mrb[0].mxu0 %v8464
  %v8813 = vpop.f32.mrb[0].mxu0
  %v8814 = vadd.f32 0.0, %v8813
  %v8815 = vpop.f32.mrb[0].mxu0
  %8816 = vmatprep.mubr.f32.mxu0 0.0
  %8817 = vmatmul.mubr.f32.gmra.mrb[0].mxu0 %v8467
  %v8818 = vpop.f32.mrb[0].mxu0
  %v8819 = vadd.f32 0.0, %v8818
  %v8820 = vpop.f32.mrb[0].mxu0
  %8821 = vmatprep.mubr.f32.mxu0 0.0
  %8822 = vmatmul.mubr.f32.gmra.mrb[0].mxu0 %v8470
  %v8823 = vpop.f32.mrb[0].mxu0
  %v8824 = vadd.f32 0.0, %v8823
  %v8825 = vpop.f32.mrb[0].mxu0
  %8826 = vmatprep.mubr.f32.mxu0 0.0
  %8827 = vmatmul.mubr.f32.gmra.mrb[0].mxu0 %v8473
  %v8828 = vpop.f32.mrb[0].mxu0
  %v8829 = vadd.f32 0.0, %v8828
  %v8830 = vpop.f32.mrb[0].mxu0
  %8831 = vmatprep.mubr.f32.mxu0 0.0
  %8832 = vmatmul.mubr.f32.gmra.mrb[0].mxu0 %v8476
  %v8833 = vpop.f32.mrb[0].mxu0
  %v8834 = vadd.f32 0.0, %v8833
  %v8835 = vpop.f32.mrb[0].mxu0
  %8836 = vmatprep.mubr.f32.mxu0 0.0
  %8837 = vmatmul.mubr.f32.gmra.mrb[0].mxu0 %v8479
  %v8838 = vpop.f32.mrb[0].mxu0
  %v8839 = vadd.f32 0.0, %v8838
  %v8840 = vpop.f32.mrb[0].mxu0
  %8841 = vmatprep.mubr.f32.mxu0 0.0
  %8842 = vmatmul.mubr.f32.gmra.mrb[0].mxu0 %v8482
  %v8843 = vpop.f32.mrb[0].mxu0
  %v8844 = vadd.f32 0.0, %v8843
  %v8845 = vpop.f32.mrb[0].mxu0
  %8846 = vmatprep.mubr.f32.mxu0 0.0
  %8847 = vmatmul.mubr.f32.gmra.mrb[0].mxu0 %v8485
  %v8848 = vpop.f32.mrb[0].mxu0
  %v8849 = vadd.f32 0.0, %v8848
  %v8850 = vpop.f32.mrb[0].mxu0
  %8851 = vmatprep.mubr.f32.mxu0 0.0
  %8852 = vmatmul.mubr.f32.gmra.mrb[0].mxu0 %v8488
  %v8853 = vpop.f32.mrb[0].mxu0
  %v8854 = vadd.f32 0.0, %v8853
  %v8855 = vpop.f32.mrb[0].mxu0
  %8856 = vmatprep.mubr.f32.mxu0 0.0
  %8857 = vmatmul.mubr.f32.gmra.mrb[0].mxu0 %v8491
  %v8858 = vpop.f32.mrb[0].mxu0
  %v8859 = vadd.f32 0.0, %v8858
  %v8860 = vpop.f32.mrb[0].mxu0
  %8861 = vmatprep.mubr.f32.mxu0 0.0
  %8862 = vmatmul.mubr.f32.gmra.mrb[0].mxu0 %v8494
  %v8863 = vpop.f32.mrb[0].mxu0
  %v8864 = vadd.f32 0.0, %v8863
  %v8865 = vpop.f32.mrb[0].mxu0
  %8866 = vmatprep.mubr.f32.mxu0 0.0
  %8867 = vmatmul.mubr.f32.gmra.mrb[0].mxu0 %v8497
  %v8868 = vpop.f32.mrb[0].mxu0
  %v8869 = vadd.f32 0.0, %v8868
  %v8870 = vpop.f32.mrb[0].mxu0
  %8871 = vmatprep.mubr.f32.mxu0 0.0
  %8872 = vmatmul.mubr.f32.gmra.mrb[0].mxu0 %v8500
  %v8873 = vpop.f32.mrb[0].mxu0
  %v8874 = vadd.f32 0.0, %v8873
  %v8875 = vpop.f32.mrb[0].mxu0
  %8876 = vmatprep.mubr.f32.mxu0 0.0
  %8877 = vmatmul.mubr.f32.gmra.mrb[0].mxu0 %v8503
  %v8878 = vpop.f32.mrb[0].mxu0
  %v8879 = vadd.f32 0.0, %v8878
  %v8880 = vpop.f32.mrb[0].mxu0
  %8881 = vmatprep.mubr.f32.mxu0 0.0
  %8882 = vmatmul.mubr.f32.gmra.mrb[0].mxu0 %v8506
  %v8883 = vpop.f32.mrb[0].mxu0
  %v8884 = vadd.f32 0.0, %v8883
  %v8885 = vpop.f32.mrb[0].mxu0
  %8886 = vmatprep.mubr.f32.mxu0 0.0
  %8887 = vmatmul.mubr.f32.gmra.mrb[0].mxu0 %v8509
  %v8888 = vpop.f32.mrb[0].mxu0
  %v8889 = vadd.f32 0.0, %v8888
  %v8890 = vpop.f32.mrb[0].mxu0
  %8891 = vmatprep.mubr.f32.mxu0 0.0
  %8892 = vmatmul.mubr.f32.gmra.mrb[0].mxu0 %v8512
  %v8893 = vpop.f32.mrb[0].mxu0
  %v8894 = vadd.f32 0.0, %v8893
  %v8895 = vpop.f32.mrb[0].mxu0
  %8896 = vmatprep.mubr.f32.mxu0 0.0
  %8897 = vmatmul.mubr.f32.gmra.mrb[0].mxu0 %v8515
  %v8898 = vpop.f32.mrb[0].mxu0
  %v8899 = vadd.f32 0.0, %v8898
  %v8900 = vpop.f32.mrb[0].mxu0
  %8901 = vdwg.mxu0
  %v8902 = vadd.f32 %v7942, %v8584
  %v8903 = vadd.f32 %v7947, %v8589
  %v8904 = vadd.f32 %v7952, %v8594
  %v8905 = vadd.f32 %v7957, %v8599
  %v8906 = vadd.f32 %v7962, %v8604
  %v8907 = vadd.f32 %v7967, %v8609
  %v8908 = vadd.f32 %v7972, %v8614
  %v8909 = vadd.f32 %v7977, %v8619
  %v8910 = vadd.f32 %v7982, %v8624
  %v8911 = vadd.f32 %v7987, %v8629
  %v8912 = vadd.f32 %v7992, %v8634
  %v8913 = vadd.f32 %v7997, %v8639
  %v8914 = vadd.f32 %v8002, %v8644
  %v8915 = vadd.f32 %v8007, %v8649
  %v8916 = vadd.f32 %v8012, %v8654
  %v8917 = vadd.f32 %v8017, %v8659
  %v8918 = vadd.f32 %v8022, %v8664
  %v8919 = vadd.f32 %v8027, %v8669
  %v8920 = vadd.f32 %v8032, %v8674
  %v8921 = vadd.f32 %v8037, %v8679
  %v8922 = vadd.f32 %v8042, %v8684
  %v8923 = vadd.f32 %v8047, %v8689
  %v8924 = vadd.f32 %v8052, %v8694
  %v8925 = vadd.f32 %v8057, %v8699
  %v8926 = vadd.f32 %v8062, %v8704
  %v8927 = vadd.f32 %v8067, %v8709
  %v8928 = vadd.f32 %v8072, %v8714
  %v8929 = vadd.f32 %v8077, %v8719
  %v8930 = vadd.f32 %v8082, %v8724
  %v8931 = vadd.f32 %v8087, %v8729
  %v8932 = vadd.f32 %v8092, %v8734
  %v8933 = vadd.f32 %v8097, %v8739
  %v8934 = vadd.f32 %v8102, %v8744
  %v8935 = vadd.f32 %v8107, %v8749
  %v8936 = vadd.f32 %v8112, %v8754
  %v8937 = vadd.f32 %v8117, %v8759
  %v8938 = vadd.f32 %v8122, %v8764
  %v8939 = vadd.f32 %v8127, %v8769
  %v8940 = vadd.f32 %v8132, %v8774
  %v8941 = vadd.f32 %v8137, %v8779
  %v8942 = vadd.f32 %v8142, %v8784
  %v8943 = vadd.f32 %v8147, %v8789
  %v8944 = vadd.f32 %v8152, %v8794
  %v8945 = vadd.f32 %v8157, %v8799
  %v8946 = vadd.f32 %v8162, %v8804
  %v8947 = vadd.f32 %v8167, %v8809
  %v8948 = vadd.f32 %v8172, %v8814
  %v8949 = vadd.f32 %v8177, %v8819
  %v8950 = vadd.f32 %v8182, %v8824
  %v8951 = vadd.f32 %v8187, %v8829
  %v8952 = vadd.f32 %v8192, %v8834
  %v8953 = vadd.f32 %v8197, %v8839
  %v8954 = vadd.f32 %v8202, %v8844
  %v8955 = vadd.f32 %v8207, %v8849
  %v8956 = vadd.f32 %v8212, %v8854
  %v8957 = vadd.f32 %v8217, %v8859
  %v8958 = vadd.f32 %v8222, %v8864
  %v8959 = vadd.f32 %v8227, %v8869
  %v8960 = vadd.f32 %v8232, %v8874
  %v8961 = vadd.f32 %v8237, %v8879
  %v8962 = vadd.f32 %v8242, %v8884
  %v8963 = vadd.f32 %v8247, %v8889
  %v8964 = vadd.f32 %v8252, %v8894
  %v8965 = vadd.f32 %v8257, %v8899
  %v8966 = vld [vmem:[%s202] sm:$0xff]
  %v8967 = vld [vmem:[%s202 + $0x8] sm:$0xff]
  %v8968 = vld [vmem:[%s202 + $0x18] sm:$0xff]
  %v8969 = vld [vmem:[%s202 + $0x20] sm:$0xff]
  %v8970 = vld [vmem:[%s202 + $0x30] sm:$0xff]
  %v8971 = vld [vmem:[%s202 + $0x38] sm:$0xff]
  %v8972 = vld [vmem:[%s202 + $0x48] sm:$0xff]
  %v8973 = vld [vmem:[%s202 + $0x50] sm:$0xff]
  %v8974 = vld [vmem:[%s202 + $0x60] sm:$0xff]
  %v8975 = vld [vmem:[%s202 + $0x68] sm:$0xff]
  %v8976 = vld [vmem:[%s202 + $0x78] sm:$0xff]
  %v8977 = vld [vmem:[%s202 + $0x80] sm:$0xff]
  %v8978 = vld [vmem:[%s202 + $0x90] sm:$0xff]
  %v8979 = vld [vmem:[%s202 + $0x98] sm:$0xff]
  %v8980 = vld [vmem:[%s202 + $0xa8] sm:$0xff]
  %v8981 = vld [vmem:[%s202 + $0xb0] sm:$0xff]
  %v8982 = vld [vmem:[%s202 + $0xc0] sm:$0xff]
  %v8983 = vld [vmem:[%s202 + $0xc8] sm:$0xff]
  %v8984 = vld [vmem:[%s202 + $0xd8] sm:$0xff]
  %v8985 = vld [vmem:[%s202 + $0xe0] sm:$0xff]
  %v8986 = vld [vmem:[%s202 + $0xf0] sm:$0xff]
  %v8987 = vld [vmem:[%s202 + $0xf8] sm:$0xff]
  %v8988 = vld [vmem:[%s202 + $0x108] sm:$0xff]
  %v8989 = vld [vmem:[%s202 + $0x110] sm:$0xff]
  %v8990 = vld [vmem:[%s202 + $0x120] sm:$0xff]
  %v8991 = vld [vmem:[%s202 + $0x128] sm:$0xff]
  %v8992 = vld [vmem:[%s202 + $0x138] sm:$0xff]
  %v8993 = vld [vmem:[%s202 + $0x140] sm:$0xff]
  %v8994 = vld [vmem:[%s202 + $0x150] sm:$0xff]
  %v8995 = vld [vmem:[%s202 + $0x158] sm:$0xff]
  %v8996 = vld [vmem:[%s202 + $0x168] sm:$0xff]
  %v8997 = vld [vmem:[%s202 + $0x170] sm:$0xff]
  %v8998 = vld [vmem:[%s202 + $0x1b0] sm:$0xff]
  %v8999 = vld [vmem:[%s202 + $0x1b8] sm:$0xff]
  %v9000 = vld [vmem:[%s202 + $0x1c8] sm:$0xff]
  %v9001 = vld [vmem:[%s202 + $0x1d0] sm:$0xff]
  %v9002 = vld [vmem:[%s202 + $0x1e0] sm:$0xff]
  %v9003 = vld [vmem:[%s202 + $0x1e8] sm:$0xff]
  %v9004 = vld [vmem:[%s202 + $0x1f8] sm:$0xff]
  %v9005 = vld [vmem:[%s202 + $0x200] sm:$0xff]
  %v9006 = vld [vmem:[%s202 + $0x210] sm:$0xff]
  %v9007 = vld [vmem:[%s202 + $0x218] sm:$0xff]
  %v9008 = vld [vmem:[%s202 + $0x228] sm:$0xff]
  %v9009 = vld [vmem:[%s202 + $0x230] sm:$0xff]
  %v9010 = vld [vmem:[%s202 + $0x240] sm:$0xff]
  %v9011 = vld [vmem:[%s202 + $0x248] sm:$0xff]
  %v9012 = vld [vmem:[%s202 + $0x258] sm:$0xff]
  %v9013 = vld [vmem:[%s202 + $0x260] sm:$0xff]
  %v9014 = vld [vmem:[%s202 + $0x270] sm:$0xff]
  %v9015 = vld [vmem:[%s202 + $0x278] sm:$0xff]
  %v9016 = vld [vmem:[%s202 + $0x288] sm:$0xff]
  %v9017 = vld [vmem:[%s202 + $0x290] sm:$0xff]
  %v9018 = vld [vmem:[%s202 + $0x2a0] sm:$0xff]
  %v9019 = vld [vmem:[%s202 + $0x2a8] sm:$0xff]
  %v9020 = vld [vmem:[%s202 + $0x2b8] sm:$0xff]
  %v9021 = vld [vmem:[%s202 + $0x2c0] sm:$0xff]
  %v9022 = vld [vmem:[%s202 + $0x2d0] sm:$0xff]
  %v9023 = vld [vmem:[%s202 + $0x2d8] sm:$0xff]
  %v9024 = vld [vmem:[%s202 + $0x2e8] sm:$0xff]
  %v9025 = vld [vmem:[%s202 + $0x2f0] sm:$0xff]
  %v9026 = vld [vmem:[%s202 + $0x300] sm:$0xff]
  %v9027 = vld [vmem:[%s202 + $0x308] sm:$0xff]
  %v9028 = vld [vmem:[%s202 + $0x318] sm:$0xff]
  %v9029 = vld [vmem:[%s202 + $0x320] sm:$0xff]
  %v9030 = vld [vmem:[%s2 + $0x18] sm:$0xff]
  %v9032 = vsel %vm28, %v8966, 0
  %v9035 = vsel %vm28, %v8967, 0
  %v9038 = vsel %vm28, %v8968, 0
  %v9041 = vsel %vm28, %v8969, 0
  %v9044 = vsel %vm28, %v8970, 0
  %v9047 = vsel %vm28, %v8971, 0
  %v9050 = vsel %vm28, %v8972, 0
  %v9053 = vsel %vm28, %v8973, 0
  %v9056 = vsel %vm28, %v8974, 0
  %v9059 = vsel %vm28, %v8975, 0
  %v9062 = vsel %vm28, %v8976, 0
  %v9065 = vsel %vm28, %v8977, 0
  %v9068 = vsel %vm28, %v8978, 0
  %v9071 = vsel %vm28, %v8979, 0
  %v9074 = vsel %vm28, %v8980, 0
  %v9077 = vsel %vm28, %v8981, 0
  %v9080 = vsel %vm28, %v8982, 0
  %v9083 = vsel %vm28, %v8983, 0
  %v9086 = vsel %vm28, %v8984, 0
  %v9089 = vsel %vm28, %v8985, 0
  %v9092 = vsel %vm28, %v8986, 0
  %v9095 = vsel %vm28, %v8987, 0
  %v9098 = vsel %vm28, %v8988, 0
  %v9101 = vsel %vm28, %v8989, 0
  %v9104 = vsel %vm28, %v8990, 0
  %v9107 = vsel %vm28, %v8991, 0
  %v9110 = vsel %vm28, %v8992, 0
  %v9113 = vsel %vm28, %v8993, 0
  %v9116 = vsel %vm28, %v8994, 0
  %v9119 = vsel %vm28, %v8995, 0
  %v9122 = vsel %vm28, %v8996, 0
  %v9125 = vsel %vm28, %v8997, 0
  %v9128 = vsel %vm28, %v8998, 0
  %v9131 = vsel %vm28, %v8999, 0
  %v9134 = vsel %vm28, %v9000, 0
  %v9137 = vsel %vm28, %v9001, 0
  %v9140 = vsel %vm28, %v9002, 0
  %v9143 = vsel %vm28, %v9003, 0
  %v9146 = vsel %vm28, %v9004, 0
  %v9149 = vsel %vm28, %v9005, 0
  %v9152 = vsel %vm28, %v9006, 0
  %v9155 = vsel %vm28, %v9007, 0
  %v9158 = vsel %vm28, %v9008, 0
  %v9161 = vsel %vm28, %v9009, 0
  %v9164 = vsel %vm28, %v9010, 0
  %v9167 = vsel %vm28, %v9011, 0
  %v9170 = vsel %vm28, %v9012, 0
  %v9173 = vsel %vm28, %v9013, 0
  %v9176 = vsel %vm28, %v9014, 0
  %v9179 = vsel %vm28, %v9015, 0
  %v9182 = vsel %vm28, %v9016, 0
  %v9185 = vsel %vm28, %v9017, 0
  %v9188 = vsel %vm28, %v9018, 0
  %v9191 = vsel %vm28, %v9019, 0
  %v9194 = vsel %vm28, %v9020, 0
  %v9197 = vsel %vm28, %v9021, 0
  %v9200 = vsel %vm28, %v9022, 0
  %v9203 = vsel %vm28, %v9023, 0
  %v9206 = vsel %vm28, %v9024, 0
  %v9209 = vsel %vm28, %v9025, 0
  %v9212 = vsel %vm28, %v9026, 0
  %v9215 = vsel %vm28, %v9027, 0
  %v9218 = vsel %vm28, %v9028, 0
  %v9221 = vsel %vm28, %v9029, 0
  %9223 = vmatprep.subr.mxu0 0.0
  %9224 = vmatpush1.msra.mxu0 %v9030
  %9225 = vmatprep.subr.mxu0 0.0
  %9226 = vmatpush1.msra.mxu0 0.0
  %9227 = vmatprep.subr.mxu0 0.0
  %9228 = vmatpush1.msra.mxu0 0.0
  %9229 = vmatprep.subr.mxu0 0.0
  %9230 = vmatpush1.msra.mxu0 0.0
  %9231 = vmatprep.subr.mxu0 0.0
  %9232 = vmatpush1.msra.mxu0 0.0
  %9233 = vmatprep.subr.mxu0 0.0
  %9234 = vmatpush1.msra.mxu0 0.0
  %9235 = vmatprep.subr.mxu0 0.0
  %9236 = vmatpush1.msra.mxu0 0.0
  %9237 = vmatprep.subr.mxu0 0.0
  %9238 = vmatpush1.msra.mxu0 0.0
  %9239 = vmatprep.subr.mxu0 0.0
  %9240 = vmatpush1.msra.mxu0 0.0
  %9241 = vmatprep.subr.mxu0 0.0
  %9242 = vmatpush1.msra.mxu0 0.0
  %9243 = vmatprep.subr.mxu0 0.0
  %9244 = vmatpush1.msra.mxu0 0.0
  %9245 = vmatprep.subr.mxu0 0.0
  %9246 = vmatpush1.msra.mxu0 0.0
  %9247 = vmatprep.subr.mxu0 0.0
  %9248 = vmatpush1.msra.mxu0 0.0
  %9249 = vmatprep.subr.mxu0 0.0
  %9250 = vmatpush1.msra.mxu0 0.0
  %9251 = vmatprep.subr.mxu0 0.0
  %9252 = vmatpush1.msra.mxu0 0.0
  %9253 = vmatprep.subr.mxu0 0.0
  %9254 = vmatpush1.msra.mxu0 0.0
  %9255 = vmatprep.subr.mxu0 0.0
  %9256 = vmatpush1.msra.mxu0 0.0
  %9257 = vmatprep.subr.mxu0 0.0
  %9258 = vmatpush1.msra.mxu0 0.0
  %9259 = vmatprep.subr.mxu0 0.0
  %9260 = vmatpush1.msra.mxu0 0.0
  %9261 = vmatprep.subr.mxu0 0.0
  %9262 = vmatpush1.msra.mxu0 0.0
  %9263 = vmatprep.subr.mxu0 0.0
  %9264 = vmatpush1.msra.mxu0 0.0
  %9265 = vmatprep.subr.mxu0 0.0
  %9266 = vmatpush1.msra.mxu0 0.0
  %9267 = vmatprep.subr.mxu0 0.0
  %9268 = vmatpush1.msra.mxu0 0.0
  %9269 = vmatprep.subr.mxu0 0.0
  %9270 = vmatpush1.msra.mxu0 0.0
  %9271 = vmatprep.subr.mxu0 0.0
  %9272 = vmatpush1.msra.mxu0 0.0
  %9273 = vmatprep.subr.mxu0 0.0
  %9274 = vmatpush1.msra.mxu0 0.0
  %9275 = vmatprep.subr.mxu0 0.0
  %9276 = vmatpush1.msra.mxu0 0.0
  %9277 = vmatprep.subr.mxu0 0.0
  %9278 = vmatpush1.msra.mxu0 0.0
  %9279 = vmatprep.subr.mxu0 0.0
  %9280 = vmatpush1.msra.mxu0 0.0
  %9281 = vmatprep.subr.mxu0 0.0
  %9282 = vmatpush1.msra.mxu0 0.0
  %9283 = vmatprep.subr.mxu0 0.0
  %9284 = vmatpush1.msra.mxu0 0.0
  %9285 = vmatprep.subr.mxu0 0.0
  %9286 = vmatpush1.msra.mxu0 0.0
  %9287 = vmatprep.mubr.f32.mxu0 0.0
  %9288 = vmatmul.mubr.f32.gmra.mrb[0].mxu0 %v9032
  %v9289 = vpop.f32.mrb[0].mxu0
  %v9290 = vadd.f32 0.0, %v9289
  %v9291 = vpop.f32.mrb[0].mxu0
  %9292 = vmatprep.mubr.f32.mxu0 0.0
  %9293 = vmatmul.mubr.f32.gmra.mrb[0].mxu0 %v9035
  %v9294 = vpop.f32.mrb[0].mxu0
  %v9295 = vadd.f32 0.0, %v9294
  %v9296 = vpop.f32.mrb[0].mxu0
  %9297 = vmatprep.mubr.f32.mxu0 0.0
  %9298 = vmatmul.mubr.f32.gmra.mrb[0].mxu0 %v9038
  %v9299 = vpop.f32.mrb[0].mxu0
  %v9300 = vadd.f32 0.0, %v9299
  %v9301 = vpop.f32.mrb[0].mxu0
  %9302 = vmatprep.mubr.f32.mxu0 0.0
  %9303 = vmatmul.mubr.f32.gmra.mrb[0].mxu0 %v9041
  %v9304 = vpop.f32.mrb[0].mxu0
  %v9305 = vadd.f32 0.0, %v9304
  %v9306 = vpop.f32.mrb[0].mxu0
  %9307 = vmatprep.mubr.f32.mxu0 0.0
  %9308 = vmatmul.mubr.f32.gmra.mrb[0].mxu0 %v9044
  %v9309 = vpop.f32.mrb[0].mxu0
  %v9310 = vadd.f32 0.0, %v9309
  %v9311 = vpop.f32.mrb[0].mxu0
  %9312 = vmatprep.mubr.f32.mxu0 0.0
  %9313 = vmatmul.mubr.f32.gmra.mrb[0].mxu0 %v9047
  %v9314 = vpop.f32.mrb[0].mxu0
  %v9315 = vadd.f32 0.0, %v9314
  %v9316 = vpop.f32.mrb[0].mxu0
  %9317 = vmatprep.mubr.f32.mxu0 0.0
  %9318 = vmatmul.mubr.f32.gmra.mrb[0].mxu0 %v9050
  %v9319 = vpop.f32.mrb[0].mxu0
  %v9320 = vadd.f32 0.0, %v9319
  %v9321 = vpop.f32.mrb[0].mxu0
  %9322 = vmatprep.mubr.f32.mxu0 0.0
  %9323 = vmatmul.mubr.f32.gmra.mrb[0].mxu0 %v9053
  %v9324 = vpop.f32.mrb[0].mxu0
  %v9325 = vadd.f32 0.0, %v9324
  %v9326 = vpop.f32.mrb[0].mxu0
  %9327 = vmatprep.mubr.f32.mxu0 0.0
  %9328 = vmatmul.mubr.f32.gmra.mrb[0].mxu0 %v9056
  %v9329 = vpop.f32.mrb[0].mxu0
  %v9330 = vadd.f32 0.0, %v9329
  %v9331 = vpop.f32.mrb[0].mxu0
  %9332 = vmatprep.mubr.f32.mxu0 0.0
  %9333 = vmatmul.mubr.f32.gmra.mrb[0].mxu0 %v9059
  %v9334 = vpop.f32.mrb[0].mxu0
  %v9335 = vadd.f32 0.0, %v9334
  %v9336 = vpop.f32.mrb[0].mxu0
  %9337 = vmatprep.mubr.f32.mxu0 0.0
  %9338 = vmatmul.mubr.f32.gmra.mrb[0].mxu0 %v9062
  %v9339 = vpop.f32.mrb[0].mxu0
  %v9340 = vadd.f32 0.0, %v9339
  %v9341 = vpop.f32.mrb[0].mxu0
  %9342 = vmatprep.mubr.f32.mxu0 0.0
  %9343 = vmatmul.mubr.f32.gmra.mrb[0].mxu0 %v9065
  %v9344 = vpop.f32.mrb[0].mxu0
  %v9345 = vadd.f32 0.0, %v9344
  %v9346 = vpop.f32.mrb[0].mxu0
  %9347 = vmatprep.mubr.f32.mxu0 0.0
  %9348 = vmatmul.mubr.f32.gmra.mrb[0].mxu0 %v9068
  %v9349 = vpop.f32.mrb[0].mxu0
  %v9350 = vadd.f32 0.0, %v9349
  %v9351 = vpop.f32.mrb[0].mxu0
  %9352 = vmatprep.mubr.f32.mxu0 0.0
  %9353 = vmatmul.mubr.f32.gmra.mrb[0].mxu0 %v9071
  %v9354 = vpop.f32.mrb[0].mxu0
  %v9355 = vadd.f32 0.0, %v9354
  %v9356 = vpop.f32.mrb[0].mxu0
  %9357 = vmatprep.mubr.f32.mxu0 0.0
  %9358 = vmatmul.mubr.f32.gmra.mrb[0].mxu0 %v9074
  %v9359 = vpop.f32.mrb[0].mxu0
  %v9360 = vadd.f32 0.0, %v9359
  %v9361 = vpop.f32.mrb[0].mxu0
  %9362 = vmatprep.mubr.f32.mxu0 0.0
  %9363 = vmatmul.mubr.f32.gmra.mrb[0].mxu0 %v9077
  %v9364 = vpop.f32.mrb[0].mxu0
  %v9365 = vadd.f32 0.0, %v9364
  %v9366 = vpop.f32.mrb[0].mxu0
  %9367 = vmatprep.mubr.f32.mxu0 0.0
  %9368 = vmatmul.mubr.f32.gmra.mrb[0].mxu0 %v9080
  %v9369 = vpop.f32.mrb[0].mxu0
  %v9370 = vadd.f32 0.0, %v9369
  %v9371 = vpop.f32.mrb[0].mxu0
  %9372 = vmatprep.mubr.f32.mxu0 0.0
  %9373 = vmatmul.mubr.f32.gmra.mrb[0].mxu0 %v9083
  %v9374 = vpop.f32.mrb[0].mxu0
  %v9375 = vadd.f32 0.0, %v9374
  %v9376 = vpop.f32.mrb[0].mxu0
  %9377 = vmatprep.mubr.f32.mxu0 0.0
  %9378 = vmatmul.mubr.f32.gmra.mrb[0].mxu0 %v9086
  %v9379 = vpop.f32.mrb[0].mxu0
  %v9380 = vadd.f32 0.0, %v9379
  %v9381 = vpop.f32.mrb[0].mxu0
  %9382 = vmatprep.mubr.f32.mxu0 0.0
  %9383 = vmatmul.mubr.f32.gmra.mrb[0].mxu0 %v9089
  %v9384 = vpop.f32.mrb[0].mxu0
  %v9385 = vadd.f32 0.0, %v9384
  %v9386 = vpop.f32.mrb[0].mxu0
  %9387 = vmatprep.mubr.f32.mxu0 0.0
  %9388 = vmatmul.mubr.f32.gmra.mrb[0].mxu0 %v9092
  %v9389 = vpop.f32.mrb[0].mxu0
  %v9390 = vadd.f32 0.0, %v9389
  %v9391 = vpop.f32.mrb[0].mxu0
  %9392 = vmatprep.mubr.f32.mxu0 0.0
  %9393 = vmatmul.mubr.f32.gmra.mrb[0].mxu0 %v9095
  %v9394 = vpop.f32.mrb[0].mxu0
  %v9395 = vadd.f32 0.0, %v9394
  %v9396 = vpop.f32.mrb[0].mxu0
  %9397 = vmatprep.mubr.f32.mxu0 0.0
  %9398 = vmatmul.mubr.f32.gmra.mrb[0].mxu0 %v9098
  %v9399 = vpop.f32.mrb[0].mxu0
  %v9400 = vadd.f32 0.0, %v9399
  %v9401 = vpop.f32.mrb[0].mxu0
  %9402 = vmatprep.mubr.f32.mxu0 0.0
  %9403 = vmatmul.mubr.f32.gmra.mrb[0].mxu0 %v9101
  %v9404 = vpop.f32.mrb[0].mxu0
  %v9405 = vadd.f32 0.0, %v9404
  %v9406 = vpop.f32.mrb[0].mxu0
  %9407 = vmatprep.mubr.f32.mxu0 0.0
  %9408 = vmatmul.mubr.f32.gmra.mrb[0].mxu0 %v9104
  %v9409 = vpop.f32.mrb[0].mxu0
  %v9410 = vadd.f32 0.0, %v9409
  %v9411 = vpop.f32.mrb[0].mxu0
  %9412 = vmatprep.mubr.f32.mxu0 0.0
  %9413 = vmatmul.mubr.f32.gmra.mrb[0].mxu0 %v9107
  %v9414 = vpop.f32.mrb[0].mxu0
  %v9415 = vadd.f32 0.0, %v9414
  %v9416 = vpop.f32.mrb[0].mxu0
  %9417 = vmatprep.mubr.f32.mxu0 0.0
  %9418 = vmatmul.mubr.f32.gmra.mrb[0].mxu0 %v9110
  %v9419 = vpop.f32.mrb[0].mxu0
  %v9420 = vadd.f32 0.0, %v9419
  %v9421 = vpop.f32.mrb[0].mxu0
  %9422 = vmatprep.mubr.f32.mxu0 0.0
  %9423 = vmatmul.mubr.f32.gmra.mrb[0].mxu0 %v9113
  %v9424 = vpop.f32.mrb[0].mxu0
  %v9425 = vadd.f32 0.0, %v9424
  %v9426 = vpop.f32.mrb[0].mxu0
  %9427 = vmatprep.mubr.f32.mxu0 0.0
  %9428 = vmatmul.mubr.f32.gmra.mrb[0].mxu0 %v9116
  %v9429 = vpop.f32.mrb[0].mxu0
  %v9430 = vadd.f32 0.0, %v9429
  %v9431 = vpop.f32.mrb[0].mxu0
  %9432 = vmatprep.mubr.f32.mxu0 0.0
  %9433 = vmatmul.mubr.f32.gmra.mrb[0].mxu0 %v9119
  %v9434 = vpop.f32.mrb[0].mxu0
  %v9435 = vadd.f32 0.0, %v9434
  %v9436 = vpop.f32.mrb[0].mxu0
  %9437 = vmatprep.mubr.f32.mxu0 0.0
  %9438 = vmatmul.mubr.f32.gmra.mrb[0].mxu0 %v9122
  %v9439 = vpop.f32.mrb[0].mxu0
  %v9440 = vadd.f32 0.0, %v9439
  %v9441 = vpop.f32.mrb[0].mxu0
  %9442 = vmatprep.mubr.f32.mxu0 0.0
  %9443 = vmatmul.mubr.f32.gmra.mrb[0].mxu0 %v9125
  %v9444 = vpop.f32.mrb[0].mxu0
  %v9445 = vadd.f32 0.0, %v9444
  %v9446 = vpop.f32.mrb[0].mxu0
  %9447 = vmatprep.mubr.f32.mxu0 0.0
  %9448 = vmatmul.mubr.f32.gmra.mrb[0].mxu0 %v9128
  %v9449 = vpop.f32.mrb[0].mxu0
  %v9450 = vadd.f32 0.0, %v9449
  %v9451 = vpop.f32.mrb[0].mxu0
  %9452 = vmatprep.mubr.f32.mxu0 0.0
  %9453 = vmatmul.mubr.f32.gmra.mrb[0].mxu0 %v9131
  %v9454 = vpop.f32.mrb[0].mxu0
  %v9455 = vadd.f32 0.0, %v9454
  %v9456 = vpop.f32.mrb[0].mxu0
  %9457 = vmatprep.mubr.f32.mxu0 0.0
  %9458 = vmatmul.mubr.f32.gmra.mrb[0].mxu0 %v9134
  %v9459 = vpop.f32.mrb[0].mxu0
  %v9460 = vadd.f32 0.0, %v9459
  %v9461 = vpop.f32.mrb[0].mxu0
  %9462 = vmatprep.mubr.f32.mxu0 0.0
  %9463 = vmatmul.mubr.f32.gmra.mrb[0].mxu0 %v9137
  %v9464 = vpop.f32.mrb[0].mxu0
  %v9465 = vadd.f32 0.0, %v9464
  %v9466 = vpop.f32.mrb[0].mxu0
  %9467 = vmatprep.mubr.f32.mxu0 0.0
  %9468 = vmatmul.mubr.f32.gmra.mrb[0].mxu0 %v9140
  %v9469 = vpop.f32.mrb[0].mxu0
  %v9470 = vadd.f32 0.0, %v9469
  %v9471 = vpop.f32.mrb[0].mxu0
  %9472 = vmatprep.mubr.f32.mxu0 0.0
  %9473 = vmatmul.mubr.f32.gmra.mrb[0].mxu0 %v9143
  %v9474 = vpop.f32.mrb[0].mxu0
  %v9475 = vadd.f32 0.0, %v9474
  %v9476 = vpop.f32.mrb[0].mxu0
  %9477 = vmatprep.mubr.f32.mxu0 0.0
  %9478 = vmatmul.mubr.f32.gmra.mrb[0].mxu0 %v9146
  %v9479 = vpop.f32.mrb[0].mxu0
  %v9480 = vadd.f32 0.0, %v9479
  %v9481 = vpop.f32.mrb[0].mxu0
  %9482 = vmatprep.mubr.f32.mxu0 0.0
  %9483 = vmatmul.mubr.f32.gmra.mrb[0].mxu0 %v9149
  %v9484 = vpop.f32.mrb[0].mxu0
  %v9485 = vadd.f32 0.0, %v9484
  %v9486 = vpop.f32.mrb[0].mxu0
  %9487 = vmatprep.mubr.f32.mxu0 0.0
  %9488 = vmatmul.mubr.f32.gmra.mrb[0].mxu0 %v9152
  %v9489 = vpop.f32.mrb[0].mxu0
  %v9490 = vadd.f32 0.0, %v9489
  %v9491 = vpop.f32.mrb[0].mxu0
  %9492 = vmatprep.mubr.f32.mxu0 0.0
  %9493 = vmatmul.mubr.f32.gmra.mrb[0].mxu0 %v9155
  %v9494 = vpop.f32.mrb[0].mxu0
  %v9495 = vadd.f32 0.0, %v9494
  %v9496 = vpop.f32.mrb[0].mxu0
  %9497 = vmatprep.mubr.f32.mxu0 0.0
  %9498 = vmatmul.mubr.f32.gmra.mrb[0].mxu0 %v9158
  %v9499 = vpop.f32.mrb[0].mxu0
  %v9500 = vadd.f32 0.0, %v9499
  %v9501 = vpop.f32.mrb[0].mxu0
  %9502 = vmatprep.mubr.f32.mxu0 0.0
  %9503 = vmatmul.mubr.f32.gmra.mrb[0].mxu0 %v9161
  %v9504 = vpop.f32.mrb[0].mxu0
  %v9505 = vadd.f32 0.0, %v9504
  %v9506 = vpop.f32.mrb[0].mxu0
  %9507 = vmatprep.mubr.f32.mxu0 0.0
  %9508 = vmatmul.mubr.f32.gmra.mrb[0].mxu0 %v9164
  %v9509 = vpop.f32.mrb[0].mxu0
  %v9510 = vadd.f32 0.0, %v9509
  %v9511 = vpop.f32.mrb[0].mxu0
  %9512 = vmatprep.mubr.f32.mxu0 0.0
  %9513 = vmatmul.mubr.f32.gmra.mrb[0].mxu0 %v9167
  %v9514 = vpop.f32.mrb[0].mxu0
  %v9515 = vadd.f32 0.0, %v9514
  %v9516 = vpop.f32.mrb[0].mxu0
  %9517 = vmatprep.mubr.f32.mxu0 0.0
  %9518 = vmatmul.mubr.f32.gmra.mrb[0].mxu0 %v9170
  %v9519 = vpop.f32.mrb[0].mxu0
  %v9520 = vadd.f32 0.0, %v9519
  %v9521 = vpop.f32.mrb[0].mxu0
  %9522 = vmatprep.mubr.f32.mxu0 0.0
  %9523 = vmatmul.mubr.f32.gmra.mrb[0].mxu0 %v9173
  %v9524 = vpop.f32.mrb[0].mxu0
  %v9525 = vadd.f32 0.0, %v9524
  %v9526 = vpop.f32.mrb[0].mxu0
  %9527 = vmatprep.mubr.f32.mxu0 0.0
  %9528 = vmatmul.mubr.f32.gmra.mrb[0].mxu0 %v9176
  %v9529 = vpop.f32.mrb[0].mxu0
  %v9530 = vadd.f32 0.0, %v9529
  %v9531 = vpop.f32.mrb[0].mxu0
  %9532 = vmatprep.mubr.f32.mxu0 0.0
  %9533 = vmatmul.mubr.f32.gmra.mrb[0].mxu0 %v9179
  %v9534 = vpop.f32.mrb[0].mxu0
  %v9535 = vadd.f32 0.0, %v9534
  %v9536 = vpop.f32.mrb[0].mxu0
  %9537 = vmatprep.mubr.f32.mxu0 0.0
  %9538 = vmatmul.mubr.f32.gmra.mrb[0].mxu0 %v9182
  %v9539 = vpop.f32.mrb[0].mxu0
  %v9540 = vadd.f32 0.0, %v9539
  %v9541 = vpop.f32.mrb[0].mxu0
  %9542 = vmatprep.mubr.f32.mxu0 0.0
  %9543 = vmatmul.mubr.f32.gmra.mrb[0].mxu0 %v9185
  %v9544 = vpop.f32.mrb[0].mxu0
  %v9545 = vadd.f32 0.0, %v9544
  %v9546 = vpop.f32.mrb[0].mxu0
  %9547 = vmatprep.mubr.f32.mxu0 0.0
  %9548 = vmatmul.mubr.f32.gmra.mrb[0].mxu0 %v9188
  %v9549 = vpop.f32.mrb[0].mxu0
  %v9550 = vadd.f32 0.0, %v9549
  %v9551 = vpop.f32.mrb[0].mxu0
  %9552 = vmatprep.mubr.f32.mxu0 0.0
  %9553 = vmatmul.mubr.f32.gmra.mrb[0].mxu0 %v9191
  %v9554 = vpop.f32.mrb[0].mxu0
  %v9555 = vadd.f32 0.0, %v9554
  %v9556 = vpop.f32.mrb[0].mxu0
  %9557 = vmatprep.mubr.f32.mxu0 0.0
  %9558 = vmatmul.mubr.f32.gmra.mrb[0].mxu0 %v9194
  %v9559 = vpop.f32.mrb[0].mxu0
  %v9560 = vadd.f32 0.0, %v9559
  %v9561 = vpop.f32.mrb[0].mxu0
  %9562 = vmatprep.mubr.f32.mxu0 0.0
  %9563 = vmatmul.mubr.f32.gmra.mrb[0].mxu0 %v9197
  %v9564 = vpop.f32.mrb[0].mxu0
  %v9565 = vadd.f32 0.0, %v9564
  %v9566 = vpop.f32.mrb[0].mxu0
  %9567 = vmatprep.mubr.f32.mxu0 0.0
  %9568 = vmatmul.mubr.f32.gmra.mrb[0].mxu0 %v9200
  %v9569 = vpop.f32.mrb[0].mxu0
  %v9570 = vadd.f32 0.0, %v9569
  %v9571 = vpop.f32.mrb[0].mxu0
  %9572 = vmatprep.mubr.f32.mxu0 0.0
  %9573 = vmatmul.mubr.f32.gmra.mrb[0].mxu0 %v9203
  %v9574 = vpop.f32.mrb[0].mxu0
  %v9575 = vadd.f32 0.0, %v9574
  %v9576 = vpop.f32.mrb[0].mxu0
  %9577 = vmatprep.mubr.f32.mxu0 0.0
  %9578 = vmatmul.mubr.f32.gmra.mrb[0].mxu0 %v9206
  %v9579 = vpop.f32.mrb[0].mxu0
  %v9580 = vadd.f32 0.0, %v9579
  %v9581 = vpop.f32.mrb[0].mxu0
  %9582 = vmatprep.mubr.f32.mxu0 0.0
  %9583 = vmatmul.mubr.f32.gmra.mrb[0].mxu0 %v9209
  %v9584 = vpop.f32.mrb[0].mxu0
  %v9585 = vadd.f32 0.0, %v9584
  %v9586 = vpop.f32.mrb[0].mxu0
  %9587 = vmatprep.mubr.f32.mxu0 0.0
  %9588 = vmatmul.mubr.f32.gmra.mrb[0].mxu0 %v9212
  %v9589 = vpop.f32.mrb[0].mxu0
  %v9590 = vadd.f32 0.0, %v9589
  %v9591 = vpop.f32.mrb[0].mxu0
  %9592 = vmatprep.mubr.f32.mxu0 0.0
  %9593 = vmatmul.mubr.f32.gmra.mrb[0].mxu0 %v9215
  %v9594 = vpop.f32.mrb[0].mxu0
  %v9595 = vadd.f32 0.0, %v9594
  %v9596 = vpop.f32.mrb[0].mxu0
  %9597 = vmatprep.mubr.f32.mxu0 0.0
  %9598 = vmatmul.mubr.f32.gmra.mrb[0].mxu0 %v9218
  %v9599 = vpop.f32.mrb[0].mxu0
  %v9600 = vadd.f32 0.0, %v9599
  %v9601 = vpop.f32.mrb[0].mxu0
  %9602 = vmatprep.mubr.f32.mxu0 0.0
  %9603 = vmatmul.mubr.f32.gmra.mrb[0].mxu0 %v9221
  %v9604 = vpop.f32.mrb[0].mxu0
  %v9605 = vadd.f32 0.0, %v9604
  %v9606 = vpop.f32.mrb[0].mxu0
  %9607 = vdwg.mxu0
  %v9608 = vadd.f32 %v8902, %v9290
  %v9609 = vadd.f32 %v8903, %v9295
  %v9610 = vadd.f32 %v8904, %v9300
  %v9611 = vadd.f32 %v8905, %v9305
  %v9612 = vadd.f32 %v8906, %v9310
  %v9613 = vadd.f32 %v8907, %v9315
  %v9614 = vadd.f32 %v8908, %v9320
  %v9615 = vadd.f32 %v8909, %v9325
  %v9616 = vadd.f32 %v8910, %v9330
  %v9617 = vadd.f32 %v8911, %v9335
  %v9618 = vadd.f32 %v8912, %v9340
  %v9619 = vadd.f32 %v8913, %v9345
  %v9620 = vadd.f32 %v8914, %v9350
  %v9621 = vadd.f32 %v8915, %v9355
  %v9622 = vadd.f32 %v8916, %v9360
  %v9623 = vadd.f32 %v8917, %v9365
  %v9624 = vadd.f32 %v8918, %v9370
  %v9625 = vadd.f32 %v8919, %v9375
  %v9626 = vadd.f32 %v8920, %v9380
  %v9627 = vadd.f32 %v8921, %v9385
  %v9628 = vadd.f32 %v8922, %v9390
  %v9629 = vadd.f32 %v8923, %v9395
  %v9630 = vadd.f32 %v8924, %v9400
  %v9631 = vadd.f32 %v8925, %v9405
  %v9632 = vadd.f32 %v8926, %v9410
  %v9633 = vadd.f32 %v8927, %v9415
  %v9634 = vadd.f32 %v8928, %v9420
  %v9635 = vadd.f32 %v8929, %v9425
  %v9636 = vadd.f32 %v8930, %v9430
  %v9637 = vadd.f32 %v8931, %v9435
  %v9638 = vadd.f32 %v8932, %v9440
  %v9639 = vadd.f32 %v8933, %v9445
  %v9640 = vadd.f32 %v8934, %v9450
  %v9641 = vadd.f32 %v8935, %v9455
  %v9642 = vadd.f32 %v8936, %v9460
  %v9643 = vadd.f32 %v8937, %v9465
  %v9644 = vadd.f32 %v8938, %v9470
  %v9645 = vadd.f32 %v8939, %v9475
  %v9646 = vadd.f32 %v8940, %v9480
  %v9647 = vadd.f32 %v8941, %v9485
  %v9648 = vadd.f32 %v8942, %v9490
  %v9649 = vadd.f32 %v8943, %v9495
  %v9650 = vadd.f32 %v8944, %v9500
  %v9651 = vadd.f32 %v8945, %v9505
  %v9652 = vadd.f32 %v8946, %v9510
  %v9653 = vadd.f32 %v8947, %v9515
  %v9654 = vadd.f32 %v8948, %v9520
  %v9655 = vadd.f32 %v8949, %v9525
  %v9656 = vadd.f32 %v8950, %v9530
  %v9657 = vadd.f32 %v8951, %v9535
  %v9658 = vadd.f32 %v8952, %v9540
  %v9659 = vadd.f32 %v8953, %v9545
  %v9660 = vadd.f32 %v8954, %v9550
  %v9661 = vadd.f32 %v8955, %v9555
  %v9662 = vadd.f32 %v8956, %v9560
  %v9663 = vadd.f32 %v8957, %v9565
  %v9664 = vadd.f32 %v8958, %v9570
  %v9665 = vadd.f32 %v8959, %v9575
  %v9666 = vadd.f32 %v8960, %v9580
  %v9667 = vadd.f32 %v8961, %v9585
  %v9668 = vadd.f32 %v8962, %v9590
  %v9669 = vadd.f32 %v8963, %v9595
  %v9670 = vadd.f32 %v8964, %v9600
  %v9671 = vadd.f32 %v8965, %v9605
  %v9672 = vld [vmem:[%s202 + $0x1] sm:$0xff]
  %v9673 = vld [vmem:[%s202 + $0x9] sm:$0xff]
  %v9674 = vld [vmem:[%s202 + $0x19] sm:$0xff]
  %v9675 = vld [vmem:[%s202 + $0x21] sm:$0xff]
  %v9676 = vld [vmem:[%s202 + $0x31] sm:$0xff]
  %v9677 = vld [vmem:[%s202 + $0x39] sm:$0xff]
  %v9678 = vld [vmem:[%s202 + $0x49] sm:$0xff]
  %v9679 = vld [vmem:[%s202 + $0x51] sm:$0xff]
  %v9680 = vld [vmem:[%s202 + $0x61] sm:$0xff]
  %v9681 = vld [vmem:[%s202 + $0x69] sm:$0xff]
  %v9682 = vld [vmem:[%s202 + $0x79] sm:$0xff]
  %v9683 = vld [vmem:[%s202 + $0x81] sm:$0xff]
  %v9684 = vld [vmem:[%s202 + $0x91] sm:$0xff]
  %v9685 = vld [vmem:[%s202 + $0x99] sm:$0xff]
  %v9686 = vld [vmem:[%s202 + $0xa9] sm:$0xff]
  %v9687 = vld [vmem:[%s202 + $0xb1] sm:$0xff]
  %v9688 = vld [vmem:[%s202 + $0xc1] sm:$0xff]
  %v9689 = vld [vmem:[%s202 + $0xc9] sm:$0xff]
  %v9690 = vld [vmem:[%s202 + $0xd9] sm:$0xff]
  %v9691 = vld [vmem:[%s202 + $0xe1] sm:$0xff]
  %v9692 = vld [vmem:[%s202 + $0xf1] sm:$0xff]
  %v9693 = vld [vmem:[%s202 + $0xf9] sm:$0xff]
  %v9694 = vld [vmem:[%s202 + $0x109] sm:$0xff]
  %v9695 = vld [vmem:[%s202 + $0x111] sm:$0xff]
  %v9696 = vld [vmem:[%s202 + $0x121] sm:$0xff]
  %v9697 = vld [vmem:[%s202 + $0x129] sm:$0xff]
  %v9698 = vld [vmem:[%s202 + $0x139] sm:$0xff]
  %v9699 = vld [vmem:[%s202 + $0x141] sm:$0xff]
  %v9700 = vld [vmem:[%s202 + $0x151] sm:$0xff]
  %v9701 = vld [vmem:[%s202 + $0x159] sm:$0xff]
  %v9702 = vld [vmem:[%s202 + $0x169] sm:$0xff]
  %v9703 = vld [vmem:[%s202 + $0x171] sm:$0xff]
  %v9704 = vld [vmem:[%s202 + $0x1b1] sm:$0xff]
  %v9705 = vld [vmem:[%s202 + $0x1b9] sm:$0xff]
  %v9706 = vld [vmem:[%s202 + $0x1c9] sm:$0xff]
  %v9707 = vld [vmem:[%s202 + $0x1d1] sm:$0xff]
  %v9708 = vld [vmem:[%s202 + $0x1e1] sm:$0xff]
  %v9709 = vld [vmem:[%s202 + $0x1e9] sm:$0xff]
  %v9710 = vld [vmem:[%s202 + $0x1f9] sm:$0xff]
  %v9711 = vld [vmem:[%s202 + $0x201] sm:$0xff]
  %v9712 = vld [vmem:[%s202 + $0x211] sm:$0xff]
  %v9713 = vld [vmem:[%s202 + $0x219] sm:$0xff]
  %v9714 = vld [vmem:[%s202 + $0x229] sm:$0xff]
  %v9715 = vld [vmem:[%s202 + $0x231] sm:$0xff]
  %v9716 = vld [vmem:[%s202 + $0x241] sm:$0xff]
  %v9717 = vld [vmem:[%s202 + $0x249] sm:$0xff]
  %v9718 = vld [vmem:[%s202 + $0x259] sm:$0xff]
  %v9719 = vld [vmem:[%s202 + $0x261] sm:$0xff]
  %v9720 = vld [vmem:[%s202 + $0x271] sm:$0xff]
  %v9721 = vld [vmem:[%s202 + $0x279] sm:$0xff]
  %v9722 = vld [vmem:[%s202 + $0x289] sm:$0xff]
  %v9723 = vld [vmem:[%s202 + $0x291] sm:$0xff]
  %v9724 = vld [vmem:[%s202 + $0x2a1] sm:$0xff]
  %v9725 = vld [vmem:[%s202 + $0x2a9] sm:$0xff]
  %v9726 = vld [vmem:[%s202 + $0x2b9] sm:$0xff]
  %v9727 = vld [vmem:[%s202 + $0x2c1] sm:$0xff]
  %v9728 = vld [vmem:[%s202 + $0x2d1] sm:$0xff]
  %v9729 = vld [vmem:[%s202 + $0x2d9] sm:$0xff]
  %v9730 = vld [vmem:[%s202 + $0x2e9] sm:$0xff]
  %v9731 = vld [vmem:[%s202 + $0x2f1] sm:$0xff]
  %v9732 = vld [vmem:[%s202 + $0x301] sm:$0xff]
  %v9733 = vld [vmem:[%s202 + $0x309] sm:$0xff]
  %v9734 = vld [vmem:[%s202 + $0x319] sm:$0xff]
  %v9735 = vld [vmem:[%s202 + $0x321] sm:$0xff]
  %v9736 = vld [vmem:[%s2 + $0x20] sm:$0xff]
  %v9738 = vsel %vm28, %v9672, 0
  %v9741 = vsel %vm28, %v9673, 0
  %v9744 = vsel %vm28, %v9674, 0
  %v9747 = vsel %vm28, %v9675, 0
  %v9750 = vsel %vm28, %v9676, 0
  %v9753 = vsel %vm28, %v9677, 0
  %v9756 = vsel %vm28, %v9678, 0
  %v9759 = vsel %vm28, %v9679, 0
  %v9762 = vsel %vm28, %v9680, 0
  %v9765 = vsel %vm28, %v9681, 0
  %v9768 = vsel %vm28, %v9682, 0
  %v9771 = vsel %vm28, %v9683, 0
  %v9774 = vsel %vm28, %v9684, 0
  %v9777 = vsel %vm28, %v9685, 0
  %v9780 = vsel %vm28, %v9686, 0
  %v9783 = vsel %vm28, %v9687, 0
  %v9786 = vsel %vm28, %v9688, 0
  %v9789 = vsel %vm28, %v9689, 0
  %v9792 = vsel %vm28, %v9690, 0
  %v9795 = vsel %vm28, %v9691, 0
  %v9798 = vsel %vm28, %v9692, 0
  %v9801 = vsel %vm28, %v9693, 0
  %v9804 = vsel %vm28, %v9694, 0
  %v9807 = vsel %vm28, %v9695, 0
  %v9810 = vsel %vm28, %v9696, 0
  %v9813 = vsel %vm28, %v9697, 0
  %v9816 = vsel %vm28, %v9698, 0
  %v9819 = vsel %vm28, %v9699, 0
  %v9822 = vsel %vm28, %v9700, 0
  %v9825 = vsel %vm28, %v9701, 0
  %v9828 = vsel %vm28, %v9702, 0
  %v9831 = vsel %vm28, %v9703, 0
  %v9834 = vsel %vm28, %v9704, 0
  %v9837 = vsel %vm28, %v9705, 0
  %v9840 = vsel %vm28, %v9706, 0
  %v9843 = vsel %vm28, %v9707, 0
  %v9846 = vsel %vm28, %v9708, 0
  %v9849 = vsel %vm28, %v9709, 0
  %v9852 = vsel %vm28, %v9710, 0
  %v9855 = vsel %vm28, %v9711, 0
  %v9858 = vsel %vm28, %v9712, 0
  %v9861 = vsel %vm28, %v9713, 0
  %v9864 = vsel %vm28, %v9714, 0
  %v9867 = vsel %vm28, %v9715, 0
  %v9870 = vsel %vm28, %v9716, 0
  %v9873 = vsel %vm28, %v9717, 0
  %v9876 = vsel %vm28, %v9718, 0
  %v9879 = vsel %vm28, %v9719, 0
  %v9882 = vsel %vm28, %v9720, 0
  %v9885 = vsel %vm28, %v9721, 0
  %v9888 = vsel %vm28, %v9722, 0
  %v9891 = vsel %vm28, %v9723, 0
  %v9894 = vsel %vm28, %v9724, 0
  %v9897 = vsel %vm28, %v9725, 0
  %v9900 = vsel %vm28, %v9726, 0
  %v9903 = vsel %vm28, %v9727, 0
  %v9906 = vsel %vm28, %v9728, 0
  %v9909 = vsel %vm28, %v9729, 0
  %v9912 = vsel %vm28, %v9730, 0
  %v9915 = vsel %vm28, %v9731, 0
  %v9918 = vsel %vm28, %v9732, 0
  %v9921 = vsel %vm28, %v9733, 0
  %v9924 = vsel %vm28, %v9734, 0
  %v9927 = vsel %vm28, %v9735, 0
  %9929 = vmatprep.subr.mxu0 0.0
  %9930 = vmatpush1.msra.mxu0 %v9736
  %9931 = vmatprep.subr.mxu0 0.0
  %9932 = vmatpush1.msra.mxu0 0.0
  %9933 = vmatprep.subr.mxu0 0.0
  %9934 = vmatpush1.msra.mxu0 0.0
  %9935 = vmatprep.subr.mxu0 0.0
  %9936 = vmatpush1.msra.mxu0 0.0
  %9937 = vmatprep.subr.mxu0 0.0
  %9938 = vmatpush1.msra.mxu0 0.0
  %9939 = vmatprep.subr.mxu0 0.0
  %9940 = vmatpush1.msra.mxu0 0.0
  %9941 = vmatprep.subr.mxu0 0.0
  %9942 = vmatpush1.msra.mxu0 0.0
  %9943 = vmatprep.subr.mxu0 0.0
  %9944 = vmatpush1.msra.mxu0 0.0
  %9945 = vmatprep.subr.mxu0 0.0
  %9946 = vmatpush1.msra.mxu0 0.0
  %9947 = vmatprep.subr.mxu0 0.0
  %9948 = vmatpush1.msra.mxu0 0.0
  %9949 = vmatprep.subr.mxu0 0.0
  %9950 = vmatpush1.msra.mxu0 0.0
  %9951 = vmatprep.subr.mxu0 0.0
  %9952 = vmatpush1.msra.mxu0 0.0
  %9953 = vmatprep.subr.mxu0 0.0
  %9954 = vmatpush1.msra.mxu0 0.0
  %9955 = vmatprep.subr.mxu0 0.0
  %9956 = vmatpush1.msra.mxu0 0.0
  %9957 = vmatprep.subr.mxu0 0.0
  %9958 = vmatpush1.msra.mxu0 0.0
  %9959 = vmatprep.subr.mxu0 0.0
  %9960 = vmatpush1.msra.mxu0 0.0
  %9961 = vmatprep.subr.mxu0 0.0
  %9962 = vmatpush1.msra.mxu0 0.0
  %9963 = vmatprep.subr.mxu0 0.0
  %9964 = vmatpush1.msra.mxu0 0.0
  %9965 = vmatprep.subr.mxu0 0.0
  %9966 = vmatpush1.msra.mxu0 0.0
  %9967 = vmatprep.subr.mxu0 0.0
  %9968 = vmatpush1.msra.mxu0 0.0
  %9969 = vmatprep.subr.mxu0 0.0
  %9970 = vmatpush1.msra.mxu0 0.0
  %9971 = vmatprep.subr.mxu0 0.0
  %9972 = vmatpush1.msra.mxu0 0.0
  %9973 = vmatprep.subr.mxu0 0.0
  %9974 = vmatpush1.msra.mxu0 0.0
  %9975 = vmatprep.subr.mxu0 0.0
  %9976 = vmatpush1.msra.mxu0 0.0
  %9977 = vmatprep.subr.mxu0 0.0
  %9978 = vmatpush1.msra.mxu0 0.0
  %9979 = vmatprep.subr.mxu0 0.0
  %9980 = vmatpush1.msra.mxu0 0.0
  %9981 = vmatprep.subr.mxu0 0.0
  %9982 = vmatpush1.msra.mxu0 0.0
  %9983 = vmatprep.subr.mxu0 0.0
  %9984 = vmatpush1.msra.mxu0 0.0
  %9985 = vmatprep.subr.mxu0 0.0
  %9986 = vmatpush1.msra.mxu0 0.0
  %9987 = vmatprep.subr.mxu0 0.0
  %9988 = vmatpush1.msra.mxu0 0.0
  %9989 = vmatprep.subr.mxu0 0.0
  %9990 = vmatpush1.msra.mxu0 0.0
  %9991 = vmatprep.subr.mxu0 0.0
  %9992 = vmatpush1.msra.mxu0 0.0
  %9993 = vmatprep.mubr.f32.mxu0 0.0
  %9994 = vmatmul.mubr.f32.gmra.mrb[0].mxu0 %v9738
  %v9995 = vpop.f32.mrb[0].mxu0
  %v9996 = vadd.f32 0.0, %v9995
  %v9997 = vpop.f32.mrb[0].mxu0
  %9998 = vmatprep.mubr.f32.mxu0 0.0
  %9999 = vmatmul.mubr.f32.gmra.mrb[0].mxu0 %v9741
  %v10000 = vpop.f32.mrb[0].mxu0
  %v10001 = vadd.f32 0.0, %v10000
  %v10002 = vpop.f32.mrb[0].mxu0
  %10003 = vmatprep.mubr.f32.mxu0 0.0
  %10004 = vmatmul.mubr.f32.gmra.mrb[0].mxu0 %v9744
  %v10005 = vpop.f32.mrb[0].mxu0
  %v10006 = vadd.f32 0.0, %v10005
  %v10007 = vpop.f32.mrb[0].mxu0
  %10008 = vmatprep.mubr.f32.mxu0 0.0
  %10009 = vmatmul.mubr.f32.gmra.mrb[0].mxu0 %v9747
  %v10010 = vpop.f32.mrb[0].mxu0
  %v10011 = vadd.f32 0.0, %v10010
  %v10012 = vpop.f32.mrb[0].mxu0
  %10013 = vmatprep.mubr.f32.mxu0 0.0
  %10014 = vmatmul.mubr.f32.gmra.mrb[0].mxu0 %v9750
  %v10015 = vpop.f32.mrb[0].mxu0
  %v10016 = vadd.f32 0.0, %v10015
  %v10017 = vpop.f32.mrb[0].mxu0
  %10018 = vmatprep.mubr.f32.mxu0 0.0
  %10019 = vmatmul.mubr.f32.gmra.mrb[0].mxu0 %v9753
  %v10020 = vpop.f32.mrb[0].mxu0
  %v10021 = vadd.f32 0.0, %v10020
  %v10022 = vpop.f32.mrb[0].mxu0
  %10023 = vmatprep.mubr.f32.mxu0 0.0
  %10024 = vmatmul.mubr.f32.gmra.mrb[0].mxu0 %v9756
  %v10025 = vpop.f32.mrb[0].mxu0
  %v10026 = vadd.f32 0.0, %v10025
  %v10027 = vpop.f32.mrb[0].mxu0
  %10028 = vmatprep.mubr.f32.mxu0 0.0
  %10029 = vmatmul.mubr.f32.gmra.mrb[0].mxu0 %v9759
  %v10030 = vpop.f32.mrb[0].mxu0
  %v10031 = vadd.f32 0.0, %v10030
  %v10032 = vpop.f32.mrb[0].mxu0
  %10033 = vmatprep.mubr.f32.mxu0 0.0
  %10034 = vmatmul.mubr.f32.gmra.mrb[0].mxu0 %v9762
  %v10035 = vpop.f32.mrb[0].mxu0
  %v10036 = vadd.f32 0.0, %v10035
  %v10037 = vpop.f32.mrb[0].mxu0
  %10038 = vmatprep.mubr.f32.mxu0 0.0
  %10039 = vmatmul.mubr.f32.gmra.mrb[0].mxu0 %v9765
  %v10040 = vpop.f32.mrb[0].mxu0
  %v10041 = vadd.f32 0.0, %v10040
  %v10042 = vpop.f32.mrb[0].mxu0
  %10043 = vmatprep.mubr.f32.mxu0 0.0
  %10044 = vmatmul.mubr.f32.gmra.mrb[0].mxu0 %v9768
  %v10045 = vpop.f32.mrb[0].mxu0
  %v10046 = vadd.f32 0.0, %v10045
  %v10047 = vpop.f32.mrb[0].mxu0
  %10048 = vmatprep.mubr.f32.mxu0 0.0
  %10049 = vmatmul.mubr.f32.gmra.mrb[0].mxu0 %v9771
  %v10050 = vpop.f32.mrb[0].mxu0
  %v10051 = vadd.f32 0.0, %v10050
  %v10052 = vpop.f32.mrb[0].mxu0
  %10053 = vmatprep.mubr.f32.mxu0 0.0
  %10054 = vmatmul.mubr.f32.gmra.mrb[0].mxu0 %v9774
  %v10055 = vpop.f32.mrb[0].mxu0
  %v10056 = vadd.f32 0.0, %v10055
  %v10057 = vpop.f32.mrb[0].mxu0
  %10058 = vmatprep.mubr.f32.mxu0 0.0
  %10059 = vmatmul.mubr.f32.gmra.mrb[0].mxu0 %v9777
  %v10060 = vpop.f32.mrb[0].mxu0
  %v10061 = vadd.f32 0.0, %v10060
  %v10062 = vpop.f32.mrb[0].mxu0
  %10063 = vmatprep.mubr.f32.mxu0 0.0
  %10064 = vmatmul.mubr.f32.gmra.mrb[0].mxu0 %v9780
  %v10065 = vpop.f32.mrb[0].mxu0
  %v10066 = vadd.f32 0.0, %v10065
  %v10067 = vpop.f32.mrb[0].mxu0
  %10068 = vmatprep.mubr.f32.mxu0 0.0
  %10069 = vmatmul.mubr.f32.gmra.mrb[0].mxu0 %v9783
  %v10070 = vpop.f32.mrb[0].mxu0
  %v10071 = vadd.f32 0.0, %v10070
  %v10072 = vpop.f32.mrb[0].mxu0
  %10073 = vmatprep.mubr.f32.mxu0 0.0
  %10074 = vmatmul.mubr.f32.gmra.mrb[0].mxu0 %v9786
  %v10075 = vpop.f32.mrb[0].mxu0
  %v10076 = vadd.f32 0.0, %v10075
  %v10077 = vpop.f32.mrb[0].mxu0
  %10078 = vmatprep.mubr.f32.mxu0 0.0
  %10079 = vmatmul.mubr.f32.gmra.mrb[0].mxu0 %v9789
  %v10080 = vpop.f32.mrb[0].mxu0
  %v10081 = vadd.f32 0.0, %v10080
  %v10082 = vpop.f32.mrb[0].mxu0
  %10083 = vmatprep.mubr.f32.mxu0 0.0
  %10084 = vmatmul.mubr.f32.gmra.mrb[0].mxu0 %v9792
  %v10085 = vpop.f32.mrb[0].mxu0
  %v10086 = vadd.f32 0.0, %v10085
  %v10087 = vpop.f32.mrb[0].mxu0
  %10088 = vmatprep.mubr.f32.mxu0 0.0
  %10089 = vmatmul.mubr.f32.gmra.mrb[0].mxu0 %v9795
  %v10090 = vpop.f32.mrb[0].mxu0
  %v10091 = vadd.f32 0.0, %v10090
  %v10092 = vpop.f32.mrb[0].mxu0
  %10093 = vmatprep.mubr.f32.mxu0 0.0
  %10094 = vmatmul.mubr.f32.gmra.mrb[0].mxu0 %v9798
  %v10095 = vpop.f32.mrb[0].mxu0
  %v10096 = vadd.f32 0.0, %v10095
  %v10097 = vpop.f32.mrb[0].mxu0
  %10098 = vmatprep.mubr.f32.mxu0 0.0
  %10099 = vmatmul.mubr.f32.gmra.mrb[0].mxu0 %v9801
  %v10100 = vpop.f32.mrb[0].mxu0
  %v10101 = vadd.f32 0.0, %v10100
  %v10102 = vpop.f32.mrb[0].mxu0
  %10103 = vmatprep.mubr.f32.mxu0 0.0
  %10104 = vmatmul.mubr.f32.gmra.mrb[0].mxu0 %v9804
  %v10105 = vpop.f32.mrb[0].mxu0
  %v10106 = vadd.f32 0.0, %v10105
  %v10107 = vpop.f32.mrb[0].mxu0
  %10108 = vmatprep.mubr.f32.mxu0 0.0
  %10109 = vmatmul.mubr.f32.gmra.mrb[0].mxu0 %v9807
  %v10110 = vpop.f32.mrb[0].mxu0
  %v10111 = vadd.f32 0.0, %v10110
  %v10112 = vpop.f32.mrb[0].mxu0
  %10113 = vmatprep.mubr.f32.mxu0 0.0
  %10114 = vmatmul.mubr.f32.gmra.mrb[0].mxu0 %v9810
  %v10115 = vpop.f32.mrb[0].mxu0
  %v10116 = vadd.f32 0.0, %v10115
  %v10117 = vpop.f32.mrb[0].mxu0
  %10118 = vmatprep.mubr.f32.mxu0 0.0
  %10119 = vmatmul.mubr.f32.gmra.mrb[0].mxu0 %v9813
  %v10120 = vpop.f32.mrb[0].mxu0
  %v10121 = vadd.f32 0.0, %v10120
  %v10122 = vpop.f32.mrb[0].mxu0
  %10123 = vmatprep.mubr.f32.mxu0 0.0
  %10124 = vmatmul.mubr.f32.gmra.mrb[0].mxu0 %v9816
  %v10125 = vpop.f32.mrb[0].mxu0
  %v10126 = vadd.f32 0.0, %v10125
  %v10127 = vpop.f32.mrb[0].mxu0
  %10128 = vmatprep.mubr.f32.mxu0 0.0
  %10129 = vmatmul.mubr.f32.gmra.mrb[0].mxu0 %v9819
  %v10130 = vpop.f32.mrb[0].mxu0
  %v10131 = vadd.f32 0.0, %v10130
  %v10132 = vpop.f32.mrb[0].mxu0
  %10133 = vmatprep.mubr.f32.mxu0 0.0
  %10134 = vmatmul.mubr.f32.gmra.mrb[0].mxu0 %v9822
  %v10135 = vpop.f32.mrb[0].mxu0
  %v10136 = vadd.f32 0.0, %v10135
  %v10137 = vpop.f32.mrb[0].mxu0
  %10138 = vmatprep.mubr.f32.mxu0 0.0
  %10139 = vmatmul.mubr.f32.gmra.mrb[0].mxu0 %v9825
  %v10140 = vpop.f32.mrb[0].mxu0
  %v10141 = vadd.f32 0.0, %v10140
  %v10142 = vpop.f32.mrb[0].mxu0
  %10143 = vmatprep.mubr.f32.mxu0 0.0
  %10144 = vmatmul.mubr.f32.gmra.mrb[0].mxu0 %v9828
  %v10145 = vpop.f32.mrb[0].mxu0
  %v10146 = vadd.f32 0.0, %v10145
  %v10147 = vpop.f32.mrb[0].mxu0
  %10148 = vmatprep.mubr.f32.mxu0 0.0
  %10149 = vmatmul.mubr.f32.gmra.mrb[0].mxu0 %v9831
  %v10150 = vpop.f32.mrb[0].mxu0
  %v10151 = vadd.f32 0.0, %v10150
  %v10152 = vpop.f32.mrb[0].mxu0
  %10153 = vmatprep.mubr.f32.mxu0 0.0
  %10154 = vmatmul.mubr.f32.gmra.mrb[0].mxu0 %v9834
  %v10155 = vpop.f32.mrb[0].mxu0
  %v10156 = vadd.f32 0.0, %v10155
  %v10157 = vpop.f32.mrb[0].mxu0
  %10158 = vmatprep.mubr.f32.mxu0 0.0
  %10159 = vmatmul.mubr.f32.gmra.mrb[0].mxu0 %v9837
  %v10160 = vpop.f32.mrb[0].mxu0
  %v10161 = vadd.f32 0.0, %v10160
  %v10162 = vpop.f32.mrb[0].mxu0
  %10163 = vmatprep.mubr.f32.mxu0 0.0
  %10164 = vmatmul.mubr.f32.gmra.mrb[0].mxu0 %v9840
  %v10165 = vpop.f32.mrb[0].mxu0
  %v10166 = vadd.f32 0.0, %v10165
  %v10167 = vpop.f32.mrb[0].mxu0
  %10168 = vmatprep.mubr.f32.mxu0 0.0
  %10169 = vmatmul.mubr.f32.gmra.mrb[0].mxu0 %v9843
  %v10170 = vpop.f32.mrb[0].mxu0
  %v10171 = vadd.f32 0.0, %v10170
  %v10172 = vpop.f32.mrb[0].mxu0
  %10173 = vmatprep.mubr.f32.mxu0 0.0
  %10174 = vmatmul.mubr.f32.gmra.mrb[0].mxu0 %v9846
  %v10175 = vpop.f32.mrb[0].mxu0
  %v10176 = vadd.f32 0.0, %v10175
  %v10177 = vpop.f32.mrb[0].mxu0
  %10178 = vmatprep.mubr.f32.mxu0 0.0
  %10179 = vmatmul.mubr.f32.gmra.mrb[0].mxu0 %v9849
  %v10180 = vpop.f32.mrb[0].mxu0
  %v10181 = vadd.f32 0.0, %v10180
  %v10182 = vpop.f32.mrb[0].mxu0
  %10183 = vmatprep.mubr.f32.mxu0 0.0
  %10184 = vmatmul.mubr.f32.gmra.mrb[0].mxu0 %v9852
  %v10185 = vpop.f32.mrb[0].mxu0
  %v10186 = vadd.f32 0.0, %v10185
  %v10187 = vpop.f32.mrb[0].mxu0
  %10188 = vmatprep.mubr.f32.mxu0 0.0
  %10189 = vmatmul.mubr.f32.gmra.mrb[0].mxu0 %v9855
  %v10190 = vpop.f32.mrb[0].mxu0
  %v10191 = vadd.f32 0.0, %v10190
  %v10192 = vpop.f32.mrb[0].mxu0
  %10193 = vmatprep.mubr.f32.mxu0 0.0
  %10194 = vmatmul.mubr.f32.gmra.mrb[0].mxu0 %v9858
  %v10195 = vpop.f32.mrb[0].mxu0
  %v10196 = vadd.f32 0.0, %v10195
  %v10197 = vpop.f32.mrb[0].mxu0
  %10198 = vmatprep.mubr.f32.mxu0 0.0
  %10199 = vmatmul.mubr.f32.gmra.mrb[0].mxu0 %v9861
  %v10200 = vpop.f32.mrb[0].mxu0
  %v10201 = vadd.f32 0.0, %v10200
  %v10202 = vpop.f32.mrb[0].mxu0
  %10203 = vmatprep.mubr.f32.mxu0 0.0
  %10204 = vmatmul.mubr.f32.gmra.mrb[0].mxu0 %v9864
  %v10205 = vpop.f32.mrb[0].mxu0
  %v10206 = vadd.f32 0.0, %v10205
  %v10207 = vpop.f32.mrb[0].mxu0
  %10208 = vmatprep.mubr.f32.mxu0 0.0
  %10209 = vmatmul.mubr.f32.gmra.mrb[0].mxu0 %v9867
  %v10210 = vpop.f32.mrb[0].mxu0
  %v10211 = vadd.f32 0.0, %v10210
  %v10212 = vpop.f32.mrb[0].mxu0
  %10213 = vmatprep.mubr.f32.mxu0 0.0
  %10214 = vmatmul.mubr.f32.gmra.mrb[0].mxu0 %v9870
  %v10215 = vpop.f32.mrb[0].mxu0
  %v10216 = vadd.f32 0.0, %v10215
  %v10217 = vpop.f32.mrb[0].mxu0
  %10218 = vmatprep.mubr.f32.mxu0 0.0
  %10219 = vmatmul.mubr.f32.gmra.mrb[0].mxu0 %v9873
  %v10220 = vpop.f32.mrb[0].mxu0
  %v10221 = vadd.f32 0.0, %v10220
  %v10222 = vpop.f32.mrb[0].mxu0
  %10223 = vmatprep.mubr.f32.mxu0 0.0
  %10224 = vmatmul.mubr.f32.gmra.mrb[0].mxu0 %v9876
  %v10225 = vpop.f32.mrb[0].mxu0
  %v10226 = vadd.f32 0.0, %v10225
  %v10227 = vpop.f32.mrb[0].mxu0
  %10228 = vmatprep.mubr.f32.mxu0 0.0
  %10229 = vmatmul.mubr.f32.gmra.mrb[0].mxu0 %v9879
  %v10230 = vpop.f32.mrb[0].mxu0
  %v10231 = vadd.f32 0.0, %v10230
  %v10232 = vpop.f32.mrb[0].mxu0
  %10233 = vmatprep.mubr.f32.mxu0 0.0
  %10234 = vmatmul.mubr.f32.gmra.mrb[0].mxu0 %v9882
  %v10235 = vpop.f32.mrb[0].mxu0
  %v10236 = vadd.f32 0.0, %v10235
  %v10237 = vpop.f32.mrb[0].mxu0
  %10238 = vmatprep.mubr.f32.mxu0 0.0
  %10239 = vmatmul.mubr.f32.gmra.mrb[0].mxu0 %v9885
  %v10240 = vpop.f32.mrb[0].mxu0
  %v10241 = vadd.f32 0.0, %v10240
  %v10242 = vpop.f32.mrb[0].mxu0
  %10243 = vmatprep.mubr.f32.mxu0 0.0
  %10244 = vmatmul.mubr.f32.gmra.mrb[0].mxu0 %v9888
  %v10245 = vpop.f32.mrb[0].mxu0
  %v10246 = vadd.f32 0.0, %v10245
  %v10247 = vpop.f32.mrb[0].mxu0
  %10248 = vmatprep.mubr.f32.mxu0 0.0
  %10249 = vmatmul.mubr.f32.gmra.mrb[0].mxu0 %v9891
  %v10250 = vpop.f32.mrb[0].mxu0
  %v10251 = vadd.f32 0.0, %v10250
  %v10252 = vpop.f32.mrb[0].mxu0
  %10253 = vmatprep.mubr.f32.mxu0 0.0
  %10254 = vmatmul.mubr.f32.gmra.mrb[0].mxu0 %v9894
  %v10255 = vpop.f32.mrb[0].mxu0
  %v10256 = vadd.f32 0.0, %v10255
  %v10257 = vpop.f32.mrb[0].mxu0
  %10258 = vmatprep.mubr.f32.mxu0 0.0
  %10259 = vmatmul.mubr.f32.gmra.mrb[0].mxu0 %v9897
  %v10260 = vpop.f32.mrb[0].mxu0
  %v10261 = vadd.f32 0.0, %v10260
  %v10262 = vpop.f32.mrb[0].mxu0
  %10263 = vmatprep.mubr.f32.mxu0 0.0
  %10264 = vmatmul.mubr.f32.gmra.mrb[0].mxu0 %v9900
  %v10265 = vpop.f32.mrb[0].mxu0
  %v10266 = vadd.f32 0.0, %v10265
  %v10267 = vpop.f32.mrb[0].mxu0
  %10268 = vmatprep.mubr.f32.mxu0 0.0
  %10269 = vmatmul.mubr.f32.gmra.mrb[0].mxu0 %v9903
  %v10270 = vpop.f32.mrb[0].mxu0
  %v10271 = vadd.f32 0.0, %v10270
  %v10272 = vpop.f32.mrb[0].mxu0
  %10273 = vmatprep.mubr.f32.mxu0 0.0
  %10274 = vmatmul.mubr.f32.gmra.mrb[0].mxu0 %v9906
  %v10275 = vpop.f32.mrb[0].mxu0
  %v10276 = vadd.f32 0.0, %v10275
  %v10277 = vpop.f32.mrb[0].mxu0
  %10278 = vmatprep.mubr.f32.mxu0 0.0
  %10279 = vmatmul.mubr.f32.gmra.mrb[0].mxu0 %v9909
  %v10280 = vpop.f32.mrb[0].mxu0
  %v10281 = vadd.f32 0.0, %v10280
  %v10282 = vpop.f32.mrb[0].mxu0
  %10283 = vmatprep.mubr.f32.mxu0 0.0
  %10284 = vmatmul.mubr.f32.gmra.mrb[0].mxu0 %v9912
  %v10285 = vpop.f32.mrb[0].mxu0
  %v10286 = vadd.f32 0.0, %v10285
  %v10287 = vpop.f32.mrb[0].mxu0
  %10288 = vmatprep.mubr.f32.mxu0 0.0
  %10289 = vmatmul.mubr.f32.gmra.mrb[0].mxu0 %v9915
  %v10290 = vpop.f32.mrb[0].mxu0
  %v10291 = vadd.f32 0.0, %v10290
  %v10292 = vpop.f32.mrb[0].mxu0
  %10293 = vmatprep.mubr.f32.mxu0 0.0
  %10294 = vmatmul.mubr.f32.gmra.mrb[0].mxu0 %v9918
  %v10295 = vpop.f32.mrb[0].mxu0
  %v10296 = vadd.f32 0.0, %v10295
  %v10297 = vpop.f32.mrb[0].mxu0
  %10298 = vmatprep.mubr.f32.mxu0 0.0
  %10299 = vmatmul.mubr.f32.gmra.mrb[0].mxu0 %v9921
  %v10300 = vpop.f32.mrb[0].mxu0
  %v10301 = vadd.f32 0.0, %v10300
  %v10302 = vpop.f32.mrb[0].mxu0
  %10303 = vmatprep.mubr.f32.mxu0 0.0
  %10304 = vmatmul.mubr.f32.gmra.mrb[0].mxu0 %v9924
  %v10305 = vpop.f32.mrb[0].mxu0
  %v10306 = vadd.f32 0.0, %v10305
  %v10307 = vpop.f32.mrb[0].mxu0
  %10308 = vmatprep.mubr.f32.mxu0 0.0
  %10309 = vmatmul.mubr.f32.gmra.mrb[0].mxu0 %v9927
  %v10310 = vpop.f32.mrb[0].mxu0
  %v10311 = vadd.f32 0.0, %v10310
  %v10312 = vpop.f32.mrb[0].mxu0
  %10313 = vdwg.mxu0
  %v10314 = vadd.f32 %v9608, %v9996
  %v10315 = vadd.f32 %v9609, %v10001
  %v10316 = vadd.f32 %v9610, %v10006
  %v10317 = vadd.f32 %v9611, %v10011
  %v10318 = vadd.f32 %v9612, %v10016
  %v10319 = vadd.f32 %v9613, %v10021
  %v10320 = vadd.f32 %v9614, %v10026
  %v10321 = vadd.f32 %v9615, %v10031
  %v10322 = vadd.f32 %v9616, %v10036
  %v10323 = vadd.f32 %v9617, %v10041
  %v10324 = vadd.f32 %v9618, %v10046
  %v10325 = vadd.f32 %v9619, %v10051
  %v10326 = vadd.f32 %v9620, %v10056
  %v10327 = vadd.f32 %v9621, %v10061
  %v10328 = vadd.f32 %v9622, %v10066
  %v10329 = vadd.f32 %v9623, %v10071
  %v10330 = vadd.f32 %v9624, %v10076
  %v10331 = vadd.f32 %v9625, %v10081
  %v10332 = vadd.f32 %v9626, %v10086
  %v10333 = vadd.f32 %v9627, %v10091
  %v10334 = vadd.f32 %v9628, %v10096
  %v10335 = vadd.f32 %v9629, %v10101
  %v10336 = vadd.f32 %v9630, %v10106
  %v10337 = vadd.f32 %v9631, %v10111
  %v10338 = vadd.f32 %v9632, %v10116
  %v10339 = vadd.f32 %v9633, %v10121
  %v10340 = vadd.f32 %v9634, %v10126
  %v10341 = vadd.f32 %v9635, %v10131
  %v10342 = vadd.f32 %v9636, %v10136
  %v10343 = vadd.f32 %v9637, %v10141
  %v10344 = vadd.f32 %v9638, %v10146
  %v10345 = vadd.f32 %v9639, %v10151
  %v10346 = vadd.f32 %v9640, %v10156
  %v10347 = vadd.f32 %v9641, %v10161
  %v10348 = vadd.f32 %v9642, %v10166
  %v10349 = vadd.f32 %v9643, %v10171
  %v10350 = vadd.f32 %v9644, %v10176
  %v10351 = vadd.f32 %v9645, %v10181
  %v10352 = vadd.f32 %v9646, %v10186
  %v10353 = vadd.f32 %v9647, %v10191
  %v10354 = vadd.f32 %v9648, %v10196
  %v10355 = vadd.f32 %v9649, %v10201
  %v10356 = vadd.f32 %v9650, %v10206
  %v10357 = vadd.f32 %v9651, %v10211
  %v10358 = vadd.f32 %v9652, %v10216
  %v10359 = vadd.f32 %v9653, %v10221
  %v10360 = vadd.f32 %v9654, %v10226
  %v10361 = vadd.f32 %v9655, %v10231
  %v10362 = vadd.f32 %v9656, %v10236
  %v10363 = vadd.f32 %v9657, %v10241
  %v10364 = vadd.f32 %v9658, %v10246
  %v10365 = vadd.f32 %v9659, %v10251
  %v10366 = vadd.f32 %v9660, %v10256
  %v10367 = vadd.f32 %v9661, %v10261
  %v10368 = vadd.f32 %v9662, %v10266
  %v10369 = vadd.f32 %v9663, %v10271
  %v10370 = vadd.f32 %v9664, %v10276
  %v10371 = vadd.f32 %v9665, %v10281
  %v10372 = vadd.f32 %v9666, %v10286
  %v10373 = vadd.f32 %v9667, %v10291
  %v10374 = vadd.f32 %v9668, %v10296
  %v10375 = vadd.f32 %v9669, %v10301
  %v10376 = vadd.f32 %v9670, %v10306
  %v10377 = vadd.f32 %v9671, %v10311
  %v10378 = vld [vmem:[%s202 + $0x2] sm:$0xff]
  %v10379 = vld [vmem:[%s202 + $0xa] sm:$0xff]
  %v10380 = vld [vmem:[%s202 + $0x1a] sm:$0xff]
  %v10381 = vld [vmem:[%s202 + $0x22] sm:$0xff]
  %v10382 = vld [vmem:[%s202 + $0x32] sm:$0xff]
  %v10383 = vld [vmem:[%s202 + $0x3a] sm:$0xff]
  %v10384 = vld [vmem:[%s202 + $0x4a] sm:$0xff]
  %v10385 = vld [vmem:[%s202 + $0x52] sm:$0xff]
  %v10386 = vld [vmem:[%s202 + $0x62] sm:$0xff]
  %v10387 = vld [vmem:[%s202 + $0x6a] sm:$0xff]
  %v10388 = vld [vmem:[%s202 + $0x7a] sm:$0xff]
  %v10389 = vld [vmem:[%s202 + $0x82] sm:$0xff]
  %v10390 = vld [vmem:[%s202 + $0x92] sm:$0xff]
  %v10391 = vld [vmem:[%s202 + $0x9a] sm:$0xff]
  %v10392 = vld [vmem:[%s202 + $0xaa] sm:$0xff]
  %v10393 = vld [vmem:[%s202 + $0xb2] sm:$0xff]
  %v10394 = vld [vmem:[%s202 + $0xc2] sm:$0xff]
  %v10395 = vld [vmem:[%s202 + $0xca] sm:$0xff]
  %v10396 = vld [vmem:[%s202 + $0xda] sm:$0xff]
  %v10397 = vld [vmem:[%s202 + $0xe2] sm:$0xff]
  %v10398 = vld [vmem:[%s202 + $0xf2] sm:$0xff]
  %v10399 = vld [vmem:[%s202 + $0xfa] sm:$0xff]
  %v10400 = vld [vmem:[%s202 + $0x10a] sm:$0xff]
  %v10401 = vld [vmem:[%s202 + $0x112] sm:$0xff]
  %v10402 = vld [vmem:[%s202 + $0x122] sm:$0xff]
  %v10403 = vld [vmem:[%s202 + $0x12a] sm:$0xff]
  %v10404 = vld [vmem:[%s202 + $0x13a] sm:$0xff]
  %v10405 = vld [vmem:[%s202 + $0x142] sm:$0xff]
  %v10406 = vld [vmem:[%s202 + $0x152] sm:$0xff]
  %v10407 = vld [vmem:[%s202 + $0x15a] sm:$0xff]
  %v10408 = vld [vmem:[%s202 + $0x16a] sm:$0xff]
  %v10409 = vld [vmem:[%s202 + $0x172] sm:$0xff]
  %v10410 = vld [vmem:[%s202 + $0x1b2] sm:$0xff]
  %v10411 = vld [vmem:[%s202 + $0x1ba] sm:$0xff]
  %v10412 = vld [vmem:[%s202 + $0x1ca] sm:$0xff]
  %v10413 = vld [vmem:[%s202 + $0x1d2] sm:$0xff]
  %v10414 = vld [vmem:[%s202 + $0x1e2] sm:$0xff]
  %v10415 = vld [vmem:[%s202 + $0x1ea] sm:$0xff]
  %v10416 = vld [vmem:[%s202 + $0x1fa] sm:$0xff]
  %v10417 = vld [vmem:[%s202 + $0x202] sm:$0xff]
  %v10418 = vld [vmem:[%s202 + $0x212] sm:$0xff]
  %v10419 = vld [vmem:[%s202 + $0x21a] sm:$0xff]
  %v10420 = vld [vmem:[%s202 + $0x22a] sm:$0xff]
  %v10421 = vld [vmem:[%s202 + $0x232] sm:$0xff]
  %v10422 = vld [vmem:[%s202 + $0x242] sm:$0xff]
  %v10423 = vld [vmem:[%s202 + $0x24a] sm:$0xff]
  %v10424 = vld [vmem:[%s202 + $0x25a] sm:$0xff]
  %v10425 = vld [vmem:[%s202 + $0x262] sm:$0xff]
  %v10426 = vld [vmem:[%s202 + $0x272] sm:$0xff]
  %v10427 = vld [vmem:[%s202 + $0x27a] sm:$0xff]
  %v10428 = vld [vmem:[%s202 + $0x28a] sm:$0xff]
  %v10429 = vld [vmem:[%s202 + $0x292] sm:$0xff]
  %v10430 = vld [vmem:[%s202 + $0x2a2] sm:$0xff]
  %v10431 = vld [vmem:[%s202 + $0x2aa] sm:$0xff]
  %v10432 = vld [vmem:[%s202 + $0x2ba] sm:$0xff]
  %v10433 = vld [vmem:[%s202 + $0x2c2] sm:$0xff]
  %v10434 = vld [vmem:[%s202 + $0x2d2] sm:$0xff]
  %v10435 = vld [vmem:[%s202 + $0x2da] sm:$0xff]
  %v10436 = vld [vmem:[%s202 + $0x2ea] sm:$0xff]
  %v10437 = vld [vmem:[%s202 + $0x2f2] sm:$0xff]
  %v10438 = vld [vmem:[%s202 + $0x302] sm:$0xff]
  %v10439 = vld [vmem:[%s202 + $0x30a] sm:$0xff]
  %v10440 = vld [vmem:[%s202 + $0x31a] sm:$0xff]
  %v10441 = vld [vmem:[%s202 + $0x322] sm:$0xff]
  %v10442 = vld [vmem:[%s2 + $0x28] sm:$0xff]
  %v10444 = vsel %vm28, %v10378, 0
  %v10447 = vsel %vm28, %v10379, 0
  %v10450 = vsel %vm28, %v10380, 0
  %v10453 = vsel %vm28, %v10381, 0
  %v10456 = vsel %vm28, %v10382, 0
  %v10459 = vsel %vm28, %v10383, 0
  %v10462 = vsel %vm28, %v10384, 0
  %v10465 = vsel %vm28, %v10385, 0
  %v10468 = vsel %vm28, %v10386, 0
  %v10471 = vsel %vm28, %v10387, 0
  %v10474 = vsel %vm28, %v10388, 0
  %v10477 = vsel %vm28, %v10389, 0
  %v10480 = vsel %vm28, %v10390, 0
  %v10483 = vsel %vm28, %v10391, 0
  %v10486 = vsel %vm28, %v10392, 0
  %v10489 = vsel %vm28, %v10393, 0
  %v10492 = vsel %vm28, %v10394, 0
  %v10495 = vsel %vm28, %v10395, 0
  %v10498 = vsel %vm28, %v10396, 0
  %v10501 = vsel %vm28, %v10397, 0
  %v10504 = vsel %vm28, %v10398, 0
  %v10507 = vsel %vm28, %v10399, 0
  %v10510 = vsel %vm28, %v10400, 0
  %v10513 = vsel %vm28, %v10401, 0
  %v10516 = vsel %vm28, %v10402, 0
  %v10519 = vsel %vm28, %v10403, 0
  %v10522 = vsel %vm28, %v10404, 0
  %v10525 = vsel %vm28, %v10405, 0
  %v10528 = vsel %vm28, %v10406, 0
  %v10531 = vsel %vm28, %v10407, 0
  %v10534 = vsel %vm28, %v10408, 0
  %v10537 = vsel %vm28, %v10409, 0
  %v10540 = vsel %vm28, %v10410, 0
  %v10543 = vsel %vm28, %v10411, 0
  %v10546 = vsel %vm28, %v10412, 0
  %v10549 = vsel %vm28, %v10413, 0
  %v10552 = vsel %vm28, %v10414, 0
  %v10555 = vsel %vm28, %v10415, 0
  %v10558 = vsel %vm28, %v10416, 0
  %v10561 = vsel %vm28, %v10417, 0
  %v10564 = vsel %vm28, %v10418, 0
  %v10567 = vsel %vm28, %v10419, 0
  %v10570 = vsel %vm28, %v10420, 0
  %v10573 = vsel %vm28, %v10421, 0
  %v10576 = vsel %vm28, %v10422, 0
  %v10579 = vsel %vm28, %v10423, 0
  %v10582 = vsel %vm28, %v10424, 0
  %v10585 = vsel %vm28, %v10425, 0
  %v10588 = vsel %vm28, %v10426, 0
  %v10591 = vsel %vm28, %v10427, 0
  %v10594 = vsel %vm28, %v10428, 0
  %v10597 = vsel %vm28, %v10429, 0
  %v10600 = vsel %vm28, %v10430, 0
  %v10603 = vsel %vm28, %v10431, 0
  %v10606 = vsel %vm28, %v10432, 0
  %v10609 = vsel %vm28, %v10433, 0
  %v10612 = vsel %vm28, %v10434, 0
  %v10615 = vsel %vm28, %v10435, 0
  %v10618 = vsel %vm28, %v10436, 0
  %v10621 = vsel %vm28, %v10437, 0
  %v10624 = vsel %vm28, %v10438, 0
  %v10627 = vsel %vm28, %v10439, 0
  %v10630 = vsel %vm28, %v10440, 0
  %v10633 = vsel %vm28, %v10441, 0
  %10635 = vmatprep.subr.mxu0 0.0
  %10636 = vmatpush1.msra.mxu0 %v10442
  %10637 = vmatprep.subr.mxu0 0.0
  %10638 = vmatpush1.msra.mxu0 0.0
  %10639 = vmatprep.subr.mxu0 0.0
  %10640 = vmatpush1.msra.mxu0 0.0
  %10641 = vmatprep.subr.mxu0 0.0
  %10642 = vmatpush1.msra.mxu0 0.0
  %10643 = vmatprep.subr.mxu0 0.0
  %10644 = vmatpush1.msra.mxu0 0.0
  %10645 = vmatprep.subr.mxu0 0.0
  %10646 = vmatpush1.msra.mxu0 0.0
  %10647 = vmatprep.subr.mxu0 0.0
  %10648 = vmatpush1.msra.mxu0 0.0
  %10649 = vmatprep.subr.mxu0 0.0
  %10650 = vmatpush1.msra.mxu0 0.0
  %10651 = vmatprep.subr.mxu0 0.0
  %10652 = vmatpush1.msra.mxu0 0.0
  %10653 = vmatprep.subr.mxu0 0.0
  %10654 = vmatpush1.msra.mxu0 0.0
  %10655 = vmatprep.subr.mxu0 0.0
  %10656 = vmatpush1.msra.mxu0 0.0
  %10657 = vmatprep.subr.mxu0 0.0
  %10658 = vmatpush1.msra.mxu0 0.0
  %10659 = vmatprep.subr.mxu0 0.0
  %10660 = vmatpush1.msra.mxu0 0.0
  %10661 = vmatprep.subr.mxu0 0.0
  %10662 = vmatpush1.msra.mxu0 0.0
  %10663 = vmatprep.subr.mxu0 0.0
  %10664 = vmatpush1.msra.mxu0 0.0
  %10665 = vmatprep.subr.mxu0 0.0
  %10666 = vmatpush1.msra.mxu0 0.0
  %10667 = vmatprep.subr.mxu0 0.0
  %10668 = vmatpush1.msra.mxu0 0.0
  %10669 = vmatprep.subr.mxu0 0.0
  %10670 = vmatpush1.msra.mxu0 0.0
  %10671 = vmatprep.subr.mxu0 0.0
  %10672 = vmatpush1.msra.mxu0 0.0
  %10673 = vmatprep.subr.mxu0 0.0
  %10674 = vmatpush1.msra.mxu0 0.0
  %10675 = vmatprep.subr.mxu0 0.0
  %10676 = vmatpush1.msra.mxu0 0.0
  %10677 = vmatprep.subr.mxu0 0.0
  %10678 = vmatpush1.msra.mxu0 0.0
  %10679 = vmatprep.subr.mxu0 0.0
  %10680 = vmatpush1.msra.mxu0 0.0
  %10681 = vmatprep.subr.mxu0 0.0
  %10682 = vmatpush1.msra.mxu0 0.0
  %10683 = vmatprep.subr.mxu0 0.0
  %10684 = vmatpush1.msra.mxu0 0.0
  %10685 = vmatprep.subr.mxu0 0.0
  %10686 = vmatpush1.msra.mxu0 0.0
  %10687 = vmatprep.subr.mxu0 0.0
  %10688 = vmatpush1.msra.mxu0 0.0
  %10689 = vmatprep.subr.mxu0 0.0
  %10690 = vmatpush1.msra.mxu0 0.0
  %10691 = vmatprep.subr.mxu0 0.0
  %10692 = vmatpush1.msra.mxu0 0.0
  %10693 = vmatprep.subr.mxu0 0.0
  %10694 = vmatpush1.msra.mxu0 0.0
  %10695 = vmatprep.subr.mxu0 0.0
  %10696 = vmatpush1.msra.mxu0 0.0
  %10697 = vmatprep.subr.mxu0 0.0
  %10698 = vmatpush1.msra.mxu0 0.0
  %10699 = vmatprep.mubr.f32.mxu0 0.0
  %10700 = vmatmul.mubr.f32.gmra.mrb[0].mxu0 %v10444
  %v10701 = vpop.f32.mrb[0].mxu0
  %v10702 = vadd.f32 0.0, %v10701
  %v10703 = vpop.f32.mrb[0].mxu0
  %10704 = vmatprep.mubr.f32.mxu0 0.0
  %10705 = vmatmul.mubr.f32.gmra.mrb[0].mxu0 %v10447
  %v10706 = vpop.f32.mrb[0].mxu0
  %v10707 = vadd.f32 0.0, %v10706
  %v10708 = vpop.f32.mrb[0].mxu0
  %10709 = vmatprep.mubr.f32.mxu0 0.0
  %10710 = vmatmul.mubr.f32.gmra.mrb[0].mxu0 %v10450
  %v10711 = vpop.f32.mrb[0].mxu0
  %v10712 = vadd.f32 0.0, %v10711
  %v10713 = vpop.f32.mrb[0].mxu0
  %10714 = vmatprep.mubr.f32.mxu0 0.0
  %10715 = vmatmul.mubr.f32.gmra.mrb[0].mxu0 %v10453
  %v10716 = vpop.f32.mrb[0].mxu0
  %v10717 = vadd.f32 0.0, %v10716
  %v10718 = vpop.f32.mrb[0].mxu0
  %10719 = vmatprep.mubr.f32.mxu0 0.0
  %10720 = vmatmul.mubr.f32.gmra.mrb[0].mxu0 %v10456
  %v10721 = vpop.f32.mrb[0].mxu0
  %v10722 = vadd.f32 0.0, %v10721
  %v10723 = vpop.f32.mrb[0].mxu0
  %10724 = vmatprep.mubr.f32.mxu0 0.0
  %10725 = vmatmul.mubr.f32.gmra.mrb[0].mxu0 %v10459
  %v10726 = vpop.f32.mrb[0].mxu0
  %v10727 = vadd.f32 0.0, %v10726
  %v10728 = vpop.f32.mrb[0].mxu0
  %10729 = vmatprep.mubr.f32.mxu0 0.0
  %10730 = vmatmul.mubr.f32.gmra.mrb[0].mxu0 %v10462
  %v10731 = vpop.f32.mrb[0].mxu0
  %v10732 = vadd.f32 0.0, %v10731
  %v10733 = vpop.f32.mrb[0].mxu0
  %10734 = vmatprep.mubr.f32.mxu0 0.0
  %10735 = vmatmul.mubr.f32.gmra.mrb[0].mxu0 %v10465
  %v10736 = vpop.f32.mrb[0].mxu0
  %v10737 = vadd.f32 0.0, %v10736
  %v10738 = vpop.f32.mrb[0].mxu0
  %10739 = vmatprep.mubr.f32.mxu0 0.0
  %10740 = vmatmul.mubr.f32.gmra.mrb[0].mxu0 %v10468
  %v10741 = vpop.f32.mrb[0].mxu0
  %v10742 = vadd.f32 0.0, %v10741
  %v10743 = vpop.f32.mrb[0].mxu0
  %10744 = vmatprep.mubr.f32.mxu0 0.0
  %10745 = vmatmul.mubr.f32.gmra.mrb[0].mxu0 %v10471
  %v10746 = vpop.f32.mrb[0].mxu0
  %v10747 = vadd.f32 0.0, %v10746
  %v10748 = vpop.f32.mrb[0].mxu0
  %10749 = vmatprep.mubr.f32.mxu0 0.0
  %10750 = vmatmul.mubr.f32.gmra.mrb[0].mxu0 %v10474
  %v10751 = vpop.f32.mrb[0].mxu0
  %v10752 = vadd.f32 0.0, %v10751
  %v10753 = vpop.f32.mrb[0].mxu0
  %10754 = vmatprep.mubr.f32.mxu0 0.0
  %10755 = vmatmul.mubr.f32.gmra.mrb[0].mxu0 %v10477
  %v10756 = vpop.f32.mrb[0].mxu0
  %v10757 = vadd.f32 0.0, %v10756
  %v10758 = vpop.f32.mrb[0].mxu0
  %10759 = vmatprep.mubr.f32.mxu0 0.0
  %10760 = vmatmul.mubr.f32.gmra.mrb[0].mxu0 %v10480
  %v10761 = vpop.f32.mrb[0].mxu0
  %v10762 = vadd.f32 0.0, %v10761
  %v10763 = vpop.f32.mrb[0].mxu0
  %10764 = vmatprep.mubr.f32.mxu0 0.0
  %10765 = vmatmul.mubr.f32.gmra.mrb[0].mxu0 %v10483
  %v10766 = vpop.f32.mrb[0].mxu0
  %v10767 = vadd.f32 0.0, %v10766
  %v10768 = vpop.f32.mrb[0].mxu0
  %10769 = vmatprep.mubr.f32.mxu0 0.0
  %10770 = vmatmul.mubr.f32.gmra.mrb[0].mxu0 %v10486
  %v10771 = vpop.f32.mrb[0].mxu0
  %v10772 = vadd.f32 0.0, %v10771
  %v10773 = vpop.f32.mrb[0].mxu0
  %10774 = vmatprep.mubr.f32.mxu0 0.0
  %10775 = vmatmul.mubr.f32.gmra.mrb[0].mxu0 %v10489
  %v10776 = vpop.f32.mrb[0].mxu0
  %v10777 = vadd.f32 0.0, %v10776
  %v10778 = vpop.f32.mrb[0].mxu0
  %10779 = vmatprep.mubr.f32.mxu0 0.0
  %10780 = vmatmul.mubr.f32.gmra.mrb[0].mxu0 %v10492
  %v10781 = vpop.f32.mrb[0].mxu0
  %v10782 = vadd.f32 0.0, %v10781
  %v10783 = vpop.f32.mrb[0].mxu0
  %10784 = vmatprep.mubr.f32.mxu0 0.0
  %10785 = vmatmul.mubr.f32.gmra.mrb[0].mxu0 %v10495
  %v10786 = vpop.f32.mrb[0].mxu0
  %v10787 = vadd.f32 0.0, %v10786
  %v10788 = vpop.f32.mrb[0].mxu0
  %10789 = vmatprep.mubr.f32.mxu0 0.0
  %10790 = vmatmul.mubr.f32.gmra.mrb[0].mxu0 %v10498
  %v10791 = vpop.f32.mrb[0].mxu0
  %v10792 = vadd.f32 0.0, %v10791
  %v10793 = vpop.f32.mrb[0].mxu0
  %10794 = vmatprep.mubr.f32.mxu0 0.0
  %10795 = vmatmul.mubr.f32.gmra.mrb[0].mxu0 %v10501
  %v10796 = vpop.f32.mrb[0].mxu0
  %v10797 = vadd.f32 0.0, %v10796
  %v10798 = vpop.f32.mrb[0].mxu0
  %10799 = vmatprep.mubr.f32.mxu0 0.0
  %10800 = vmatmul.mubr.f32.gmra.mrb[0].mxu0 %v10504
  %v10801 = vpop.f32.mrb[0].mxu0
  %v10802 = vadd.f32 0.0, %v10801
  %v10803 = vpop.f32.mrb[0].mxu0
  %10804 = vmatprep.mubr.f32.mxu0 0.0
  %10805 = vmatmul.mubr.f32.gmra.mrb[0].mxu0 %v10507
  %v10806 = vpop.f32.mrb[0].mxu0
  %v10807 = vadd.f32 0.0, %v10806
  %v10808 = vpop.f32.mrb[0].mxu0
  %10809 = vmatprep.mubr.f32.mxu0 0.0
  %10810 = vmatmul.mubr.f32.gmra.mrb[0].mxu0 %v10510
  %v10811 = vpop.f32.mrb[0].mxu0
  %v10812 = vadd.f32 0.0, %v10811
  %v10813 = vpop.f32.mrb[0].mxu0
  %10814 = vmatprep.mubr.f32.mxu0 0.0
  %10815 = vmatmul.mubr.f32.gmra.mrb[0].mxu0 %v10513
  %v10816 = vpop.f32.mrb[0].mxu0
  %v10817 = vadd.f32 0.0, %v10816
  %v10818 = vpop.f32.mrb[0].mxu0
  %10819 = vmatprep.mubr.f32.mxu0 0.0
  %10820 = vmatmul.mubr.f32.gmra.mrb[0].mxu0 %v10516
  %v10821 = vpop.f32.mrb[0].mxu0
  %v10822 = vadd.f32 0.0, %v10821
  %v10823 = vpop.f32.mrb[0].mxu0
  %10824 = vmatprep.mubr.f32.mxu0 0.0
  %10825 = vmatmul.mubr.f32.gmra.mrb[0].mxu0 %v10519
  %v10826 = vpop.f32.mrb[0].mxu0
  %v10827 = vadd.f32 0.0, %v10826
  %v10828 = vpop.f32.mrb[0].mxu0
  %10829 = vmatprep.mubr.f32.mxu0 0.0
  %10830 = vmatmul.mubr.f32.gmra.mrb[0].mxu0 %v10522
  %v10831 = vpop.f32.mrb[0].mxu0
  %v10832 = vadd.f32 0.0, %v10831
  %v10833 = vpop.f32.mrb[0].mxu0
  %10834 = vmatprep.mubr.f32.mxu0 0.0
  %10835 = vmatmul.mubr.f32.gmra.mrb[0].mxu0 %v10525
  %v10836 = vpop.f32.mrb[0].mxu0
  %v10837 = vadd.f32 0.0, %v10836
  %v10838 = vpop.f32.mrb[0].mxu0
  %10839 = vmatprep.mubr.f32.mxu0 0.0
  %10840 = vmatmul.mubr.f32.gmra.mrb[0].mxu0 %v10528
  %v10841 = vpop.f32.mrb[0].mxu0
  %v10842 = vadd.f32 0.0, %v10841
  %v10843 = vpop.f32.mrb[0].mxu0
  %10844 = vmatprep.mubr.f32.mxu0 0.0
  %10845 = vmatmul.mubr.f32.gmra.mrb[0].mxu0 %v10531
  %v10846 = vpop.f32.mrb[0].mxu0
  %v10847 = vadd.f32 0.0, %v10846
  %v10848 = vpop.f32.mrb[0].mxu0
  %10849 = vmatprep.mubr.f32.mxu0 0.0
  %10850 = vmatmul.mubr.f32.gmra.mrb[0].mxu0 %v10534
  %v10851 = vpop.f32.mrb[0].mxu0
  %v10852 = vadd.f32 0.0, %v10851
  %v10853 = vpop.f32.mrb[0].mxu0
  %10854 = vmatprep.mubr.f32.mxu0 0.0
  %10855 = vmatmul.mubr.f32.gmra.mrb[0].mxu0 %v10537
  %v10856 = vpop.f32.mrb[0].mxu0
  %v10857 = vadd.f32 0.0, %v10856
  %v10858 = vpop.f32.mrb[0].mxu0
  %10859 = vmatprep.mubr.f32.mxu0 0.0
  %10860 = vmatmul.mubr.f32.gmra.mrb[0].mxu0 %v10540
  %v10861 = vpop.f32.mrb[0].mxu0
  %v10862 = vadd.f32 0.0, %v10861
  %v10863 = vpop.f32.mrb[0].mxu0
  %10864 = vmatprep.mubr.f32.mxu0 0.0
  %10865 = vmatmul.mubr.f32.gmra.mrb[0].mxu0 %v10543
  %v10866 = vpop.f32.mrb[0].mxu0
  %v10867 = vadd.f32 0.0, %v10866
  %v10868 = vpop.f32.mrb[0].mxu0
  %10869 = vmatprep.mubr.f32.mxu0 0.0
  %10870 = vmatmul.mubr.f32.gmra.mrb[0].mxu0 %v10546
  %v10871 = vpop.f32.mrb[0].mxu0
  %v10872 = vadd.f32 0.0, %v10871
  %v10873 = vpop.f32.mrb[0].mxu0
  %10874 = vmatprep.mubr.f32.mxu0 0.0
  %10875 = vmatmul.mubr.f32.gmra.mrb[0].mxu0 %v10549
  %v10876 = vpop.f32.mrb[0].mxu0
  %v10877 = vadd.f32 0.0, %v10876
  %v10878 = vpop.f32.mrb[0].mxu0
  %10879 = vmatprep.mubr.f32.mxu0 0.0
  %10880 = vmatmul.mubr.f32.gmra.mrb[0].mxu0 %v10552
  %v10881 = vpop.f32.mrb[0].mxu0
  %v10882 = vadd.f32 0.0, %v10881
  %v10883 = vpop.f32.mrb[0].mxu0
  %10884 = vmatprep.mubr.f32.mxu0 0.0
  %10885 = vmatmul.mubr.f32.gmra.mrb[0].mxu0 %v10555
  %v10886 = vpop.f32.mrb[0].mxu0
  %v10887 = vadd.f32 0.0, %v10886
  %v10888 = vpop.f32.mrb[0].mxu0
  %10889 = vmatprep.mubr.f32.mxu0 0.0
  %10890 = vmatmul.mubr.f32.gmra.mrb[0].mxu0 %v10558
  %v10891 = vpop.f32.mrb[0].mxu0
  %v10892 = vadd.f32 0.0, %v10891
  %v10893 = vpop.f32.mrb[0].mxu0
  %10894 = vmatprep.mubr.f32.mxu0 0.0
  %10895 = vmatmul.mubr.f32.gmra.mrb[0].mxu0 %v10561
  %v10896 = vpop.f32.mrb[0].mxu0
  %v10897 = vadd.f32 0.0, %v10896
  %v10898 = vpop.f32.mrb[0].mxu0
  %10899 = vmatprep.mubr.f32.mxu0 0.0
  %10900 = vmatmul.mubr.f32.gmra.mrb[0].mxu0 %v10564
  %v10901 = vpop.f32.mrb[0].mxu0
  %v10902 = vadd.f32 0.0, %v10901
  %v10903 = vpop.f32.mrb[0].mxu0
  %10904 = vmatprep.mubr.f32.mxu0 0.0
  %10905 = vmatmul.mubr.f32.gmra.mrb[0].mxu0 %v10567
  %v10906 = vpop.f32.mrb[0].mxu0
  %v10907 = vadd.f32 0.0, %v10906
  %v10908 = vpop.f32.mrb[0].mxu0
  %10909 = vmatprep.mubr.f32.mxu0 0.0
  %10910 = vmatmul.mubr.f32.gmra.mrb[0].mxu0 %v10570
  %v10911 = vpop.f32.mrb[0].mxu0
  %v10912 = vadd.f32 0.0, %v10911
  %v10913 = vpop.f32.mrb[0].mxu0
  %10914 = vmatprep.mubr.f32.mxu0 0.0
  %10915 = vmatmul.mubr.f32.gmra.mrb[0].mxu0 %v10573
  %v10916 = vpop.f32.mrb[0].mxu0
  %v10917 = vadd.f32 0.0, %v10916
  %v10918 = vpop.f32.mrb[0].mxu0
  %10919 = vmatprep.mubr.f32.mxu0 0.0
  %10920 = vmatmul.mubr.f32.gmra.mrb[0].mxu0 %v10576
  %v10921 = vpop.f32.mrb[0].mxu0
  %v10922 = vadd.f32 0.0, %v10921
  %v10923 = vpop.f32.mrb[0].mxu0
  %10924 = vmatprep.mubr.f32.mxu0 0.0
  %10925 = vmatmul.mubr.f32.gmra.mrb[0].mxu0 %v10579
  %v10926 = vpop.f32.mrb[0].mxu0
  %v10927 = vadd.f32 0.0, %v10926
  %v10928 = vpop.f32.mrb[0].mxu0
  %10929 = vmatprep.mubr.f32.mxu0 0.0
  %10930 = vmatmul.mubr.f32.gmra.mrb[0].mxu0 %v10582
  %v10931 = vpop.f32.mrb[0].mxu0
  %v10932 = vadd.f32 0.0, %v10931
  %v10933 = vpop.f32.mrb[0].mxu0
  %10934 = vmatprep.mubr.f32.mxu0 0.0
  %10935 = vmatmul.mubr.f32.gmra.mrb[0].mxu0 %v10585
  %v10936 = vpop.f32.mrb[0].mxu0
  %v10937 = vadd.f32 0.0, %v10936
  %v10938 = vpop.f32.mrb[0].mxu0
  %10939 = vmatprep.mubr.f32.mxu0 0.0
  %10940 = vmatmul.mubr.f32.gmra.mrb[0].mxu0 %v10588
  %v10941 = vpop.f32.mrb[0].mxu0
  %v10942 = vadd.f32 0.0, %v10941
  %v10943 = vpop.f32.mrb[0].mxu0
  %10944 = vmatprep.mubr.f32.mxu0 0.0
  %10945 = vmatmul.mubr.f32.gmra.mrb[0].mxu0 %v10591
  %v10946 = vpop.f32.mrb[0].mxu0
  %v10947 = vadd.f32 0.0, %v10946
  %v10948 = vpop.f32.mrb[0].mxu0
  %10949 = vmatprep.mubr.f32.mxu0 0.0
  %10950 = vmatmul.mubr.f32.gmra.mrb[0].mxu0 %v10594
  %v10951 = vpop.f32.mrb[0].mxu0
  %v10952 = vadd.f32 0.0, %v10951
  %v10953 = vpop.f32.mrb[0].mxu0
  %10954 = vmatprep.mubr.f32.mxu0 0.0
  %10955 = vmatmul.mubr.f32.gmra.mrb[0].mxu0 %v10597
  %v10956 = vpop.f32.mrb[0].mxu0
  %v10957 = vadd.f32 0.0, %v10956
  %v10958 = vpop.f32.mrb[0].mxu0
  %10959 = vmatprep.mubr.f32.mxu0 0.0
  %10960 = vmatmul.mubr.f32.gmra.mrb[0].mxu0 %v10600
  %v10961 = vpop.f32.mrb[0].mxu0
  %v10962 = vadd.f32 0.0, %v10961
  %v10963 = vpop.f32.mrb[0].mxu0
  %10964 = vmatprep.mubr.f32.mxu0 0.0
  %10965 = vmatmul.mubr.f32.gmra.mrb[0].mxu0 %v10603
  %v10966 = vpop.f32.mrb[0].mxu0
  %v10967 = vadd.f32 0.0, %v10966
  %v10968 = vpop.f32.mrb[0].mxu0
  %10969 = vmatprep.mubr.f32.mxu0 0.0
  %10970 = vmatmul.mubr.f32.gmra.mrb[0].mxu0 %v10606
  %v10971 = vpop.f32.mrb[0].mxu0
  %v10972 = vadd.f32 0.0, %v10971
  %v10973 = vpop.f32.mrb[0].mxu0
  %10974 = vmatprep.mubr.f32.mxu0 0.0
  %10975 = vmatmul.mubr.f32.gmra.mrb[0].mxu0 %v10609
  %v10976 = vpop.f32.mrb[0].mxu0
  %v10977 = vadd.f32 0.0, %v10976
  %v10978 = vpop.f32.mrb[0].mxu0
  %10979 = vmatprep.mubr.f32.mxu0 0.0
  %10980 = vmatmul.mubr.f32.gmra.mrb[0].mxu0 %v10612
  %v10981 = vpop.f32.mrb[0].mxu0
  %v10982 = vadd.f32 0.0, %v10981
  %v10983 = vpop.f32.mrb[0].mxu0
  %10984 = vmatprep.mubr.f32.mxu0 0.0
  %10985 = vmatmul.mubr.f32.gmra.mrb[0].mxu0 %v10615
  %v10986 = vpop.f32.mrb[0].mxu0
  %v10987 = vadd.f32 0.0, %v10986
  %v10988 = vpop.f32.mrb[0].mxu0
  %10989 = vmatprep.mubr.f32.mxu0 0.0
  %10990 = vmatmul.mubr.f32.gmra.mrb[0].mxu0 %v10618
  %v10991 = vpop.f32.mrb[0].mxu0
  %v10992 = vadd.f32 0.0, %v10991
  %v10993 = vpop.f32.mrb[0].mxu0
  %10994 = vmatprep.mubr.f32.mxu0 0.0
  %10995 = vmatmul.mubr.f32.gmra.mrb[0].mxu0 %v10621
  %v10996 = vpop.f32.mrb[0].mxu0
  %v10997 = vadd.f32 0.0, %v10996
  %v10998 = vpop.f32.mrb[0].mxu0
  %10999 = vmatprep.mubr.f32.mxu0 0.0
  %11000 = vmatmul.mubr.f32.gmra.mrb[0].mxu0 %v10624
  %v11001 = vpop.f32.mrb[0].mxu0
  %v11002 = vadd.f32 0.0, %v11001
  %v11003 = vpop.f32.mrb[0].mxu0
  %11004 = vmatprep.mubr.f32.mxu0 0.0
  %11005 = vmatmul.mubr.f32.gmra.mrb[0].mxu0 %v10627
  %v11006 = vpop.f32.mrb[0].mxu0
  %v11007 = vadd.f32 0.0, %v11006
  %v11008 = vpop.f32.mrb[0].mxu0
  %11009 = vmatprep.mubr.f32.mxu0 0.0
  %11010 = vmatmul.mubr.f32.gmra.mrb[0].mxu0 %v10630
  %v11011 = vpop.f32.mrb[0].mxu0
  %v11012 = vadd.f32 0.0, %v11011
  %v11013 = vpop.f32.mrb[0].mxu0
  %11014 = vmatprep.mubr.f32.mxu0 0.0
  %11015 = vmatmul.mubr.f32.gmra.mrb[0].mxu0 %v10633
  %v11016 = vpop.f32.mrb[0].mxu0
  %v11017 = vadd.f32 0.0, %v11016
  %v11018 = vpop.f32.mrb[0].mxu0
  %11019 = vdwg.mxu0
  %v11020 = vadd.f32 %v10314, %v10702
  %v11021 = vadd.f32 %v10315, %v10707
  %v11022 = vadd.f32 %v10316, %v10712
  %v11023 = vadd.f32 %v10317, %v10717
  %v11024 = vadd.f32 %v10318, %v10722
  %v11025 = vadd.f32 %v10319, %v10727
  %v11026 = vadd.f32 %v10320, %v10732
  %v11027 = vadd.f32 %v10321, %v10737
  %v11028 = vadd.f32 %v10322, %v10742
  %v11029 = vadd.f32 %v10323, %v10747
  %v11030 = vadd.f32 %v10324, %v10752
  %v11031 = vadd.f32 %v10325, %v10757
  %v11032 = vadd.f32 %v10326, %v10762
  %v11033 = vadd.f32 %v10327, %v10767
  %v11034 = vadd.f32 %v10328, %v10772
  %v11035 = vadd.f32 %v10329, %v10777
  %v11036 = vadd.f32 %v10330, %v10782
  %v11037 = vadd.f32 %v10331, %v10787
  %v11038 = vadd.f32 %v10332, %v10792
  %v11039 = vadd.f32 %v10333, %v10797
  %v11040 = vadd.f32 %v10334, %v10802
  %v11041 = vadd.f32 %v10335, %v10807
  %v11042 = vadd.f32 %v10336, %v10812
  %v11043 = vadd.f32 %v10337, %v10817
  %v11044 = vadd.f32 %v10338, %v10822
  %v11045 = vadd.f32 %v10339, %v10827
  %v11046 = vadd.f32 %v10340, %v10832
  %v11047 = vadd.f32 %v10341, %v10837
  %v11048 = vadd.f32 %v10342, %v10842
  %v11049 = vadd.f32 %v10343, %v10847
  %v11050 = vadd.f32 %v10344, %v10852
  %v11051 = vadd.f32 %v10345, %v10857
  %v11052 = vadd.f32 %v10346, %v10862
  %v11053 = vadd.f32 %v10347, %v10867
  %v11054 = vadd.f32 %v10348, %v10872
  %v11055 = vadd.f32 %v10349, %v10877
  %v11056 = vadd.f32 %v10350, %v10882
  %v11057 = vadd.f32 %v10351, %v10887
  %v11058 = vadd.f32 %v10352, %v10892
  %v11059 = vadd.f32 %v10353, %v10897
  %v11060 = vadd.f32 %v10354, %v10902
  %v11061 = vadd.f32 %v10355, %v10907
  %v11062 = vadd.f32 %v10356, %v10912
  %v11063 = vadd.f32 %v10357, %v10917
  %v11064 = vadd.f32 %v10358, %v10922
  %v11065 = vadd.f32 %v10359, %v10927
  %v11066 = vadd.f32 %v10360, %v10932
  %v11067 = vadd.f32 %v10361, %v10937
  %v11068 = vadd.f32 %v10362, %v10942
  %v11069 = vadd.f32 %v10363, %v10947
  %v11070 = vadd.f32 %v10364, %v10952
  %v11071 = vadd.f32 %v10365, %v10957
  %v11072 = vadd.f32 %v10366, %v10962
  %v11073 = vadd.f32 %v10367, %v10967
  %v11074 = vadd.f32 %v10368, %v10972
  %v11075 = vadd.f32 %v10369, %v10977
  %v11076 = vadd.f32 %v10370, %v10982
  %v11077 = vadd.f32 %v10371, %v10987
  %v11078 = vadd.f32 %v10372, %v10992
  %v11079 = vadd.f32 %v10373, %v10997
  %v11080 = vadd.f32 %v10374, %v11002
  %v11081 = vadd.f32 %v10375, %v11007
  %v11082 = vadd.f32 %v10376, %v11012
  %v11083 = vadd.f32 %v10377, %v11017
  %v11084 = vld [vmem:[%s4377] sm:$0xff]
  %v11085 = vld [vmem:[%s4377 + $0x8] sm:$0xff]
  %v11086 = vld [vmem:[%s4377 + $0x18] sm:$0xff]
  %v11087 = vld [vmem:[%s4377 + $0x20] sm:$0xff]
  %v11088 = vld [vmem:[%s4377 + $0x30] sm:$0xff]
  %v11089 = vld [vmem:[%s4377 + $0x38] sm:$0xff]
  %v11090 = vld [vmem:[%s4377 + $0x48] sm:$0xff]
  %v11091 = vld [vmem:[%s4377 + $0x50] sm:$0xff]
  %v11092 = vld [vmem:[%s4377 + $0x60] sm:$0xff]
  %v11093 = vld [vmem:[%s4377 + $0x68] sm:$0xff]
  %v11094 = vld [vmem:[%s4377 + $0x78] sm:$0xff]
  %v11095 = vld [vmem:[%s4377 + $0x80] sm:$0xff]
  %v11096 = vld [vmem:[%s4377 + $0x90] sm:$0xff]
  %v11097 = vld [vmem:[%s4377 + $0x98] sm:$0xff]
  %v11098 = vld [vmem:[%s4377 + $0xa8] sm:$0xff]
  %v11099 = vld [vmem:[%s4377 + $0xb0] sm:$0xff]
  %v11100 = vld [vmem:[%s4377 + $0xc0] sm:$0xff]
  %v11101 = vld [vmem:[%s4377 + $0xc8] sm:$0xff]
  %v11102 = vld [vmem:[%s4377 + $0xd8] sm:$0xff]
  %v11103 = vld [vmem:[%s4377 + $0xe0] sm:$0xff]
  %v11104 = vld [vmem:[%s4377 + $0xf0] sm:$0xff]
  %v11105 = vld [vmem:[%s4377 + $0xf8] sm:$0xff]
  %v11106 = vld [vmem:[%s4377 + $0x108] sm:$0xff]
  %v11107 = vld [vmem:[%s4377 + $0x110] sm:$0xff]
  %v11108 = vld [vmem:[%s4377 + $0x120] sm:$0xff]
  %v11109 = vld [vmem:[%s4377 + $0x128] sm:$0xff]
  %v11110 = vld [vmem:[%s4377 + $0x138] sm:$0xff]
  %v11111 = vld [vmem:[%s4377 + $0x140] sm:$0xff]
  %v11112 = vld [vmem:[%s4377 + $0x150] sm:$0xff]
  %v11113 = vld [vmem:[%s4377 + $0x158] sm:$0xff]
  %v11114 = vld [vmem:[%s4377 + $0x168] sm:$0xff]
  %v11115 = vld [vmem:[%s4377 + $0x170] sm:$0xff]
  %v11116 = vld [vmem:[%s4377 + $0x1b0] sm:$0xff]
  %v11117 = vld [vmem:[%s4377 + $0x1b8] sm:$0xff]
  %v11118 = vld [vmem:[%s4377 + $0x1c8] sm:$0xff]
  %v11119 = vld [vmem:[%s4377 + $0x1d0] sm:$0xff]
  %v11120 = vld [vmem:[%s4377 + $0x1e0] sm:$0xff]
  %v11121 = vld [vmem:[%s4377 + $0x1e8] sm:$0xff]
  %v11122 = vld [vmem:[%s4377 + $0x1f8] sm:$0xff]
  %v11123 = vld [vmem:[%s4377 + $0x200] sm:$0xff]
  %v11124 = vld [vmem:[%s4377 + $0x210] sm:$0xff]
  %v11125 = vld [vmem:[%s4377 + $0x218] sm:$0xff]
  %v11126 = vld [vmem:[%s4377 + $0x228] sm:$0xff]
  %v11127 = vld [vmem:[%s4377 + $0x230] sm:$0xff]
  %v11128 = vld [vmem:[%s4377 + $0x240] sm:$0xff]
  %v11129 = vld [vmem:[%s4377 + $0x248] sm:$0xff]
  %v11130 = vld [vmem:[%s4377 + $0x258] sm:$0xff]
  %v11131 = vld [vmem:[%s4377 + $0x260] sm:$0xff]
  %v11132 = vld [vmem:[%s4377 + $0x270] sm:$0xff]
  %v11133 = vld [vmem:[%s4377 + $0x278] sm:$0xff]
  %v11134 = vld [vmem:[%s4377 + $0x288] sm:$0xff]
  %v11135 = vld [vmem:[%s4377 + $0x290] sm:$0xff]
  %v11136 = vld [vmem:[%s4377 + $0x2a0] sm:$0xff]
  %v11137 = vld [vmem:[%s4377 + $0x2a8] sm:$0xff]
  %v11138 = vld [vmem:[%s4377 + $0x2b8] sm:$0xff]
  %v11139 = vld [vmem:[%s4377 + $0x2c0] sm:$0xff]
  %v11140 = vld [vmem:[%s4377 + $0x2d0] sm:$0xff]
  %v11141 = vld [vmem:[%s4377 + $0x2d8] sm:$0xff]
  %v11142 = vld [vmem:[%s4377 + $0x2e8] sm:$0xff]
  %v11143 = vld [vmem:[%s4377 + $0x2f0] sm:$0xff]
  %v11144 = vld [vmem:[%s4377 + $0x300] sm:$0xff]
  %v11145 = vld [vmem:[%s4377 + $0x308] sm:$0xff]
  %v11146 = vld [vmem:[%s4377 + $0x318] sm:$0xff]
  %v11147 = vld [vmem:[%s4377 + $0x320] sm:$0xff]
  %v11148 = vld [vmem:[%s2 + $0x30] sm:$0xff]
  %v11150 = vsel %vm28, %v11084, 0
  %v11153 = vsel %vm28, %v11085, 0
  %v11156 = vsel %vm28, %v11086, 0
  %v11159 = vsel %vm28, %v11087, 0
  %v11162 = vsel %vm28, %v11088, 0
  %v11165 = vsel %vm28, %v11089, 0
  %v11168 = vsel %vm28, %v11090, 0
  %v11171 = vsel %vm28, %v11091, 0
  %v11174 = vsel %vm28, %v11092, 0
  %v11177 = vsel %vm28, %v11093, 0
  %v11180 = vsel %vm28, %v11094, 0
  %v11183 = vsel %vm28, %v11095, 0
  %v11186 = vsel %vm28, %v11096, 0
  %v11189 = vsel %vm28, %v11097, 0
  %v11192 = vsel %vm28, %v11098, 0
  %v11195 = vsel %vm28, %v11099, 0
  %v11198 = vsel %vm28, %v11100, 0
  %v11201 = vsel %vm28, %v11101, 0
  %v11204 = vsel %vm28, %v11102, 0
  %v11207 = vsel %vm28, %v11103, 0
  %v11210 = vsel %vm28, %v11104, 0
  %v11213 = vsel %vm28, %v11105, 0
  %v11216 = vsel %vm28, %v11106, 0
  %v11219 = vsel %vm28, %v11107, 0
  %v11222 = vsel %vm28, %v11108, 0
  %v11225 = vsel %vm28, %v11109, 0
  %v11228 = vsel %vm28, %v11110, 0
  %v11231 = vsel %vm28, %v11111, 0
  %v11234 = vsel %vm28, %v11112, 0
  %v11237 = vsel %vm28, %v11113, 0
  %v11240 = vsel %vm28, %v11114, 0
  %v11243 = vsel %vm28, %v11115, 0
  %v11246 = vsel %vm28, %v11116, 0
  %v11249 = vsel %vm28, %v11117, 0
  %v11252 = vsel %vm28, %v11118, 0
  %v11255 = vsel %vm28, %v11119, 0
  %v11258 = vsel %vm28, %v11120, 0
  %v11261 = vsel %vm28, %v11121, 0
  %v11264 = vsel %vm28, %v11122, 0
  %v11267 = vsel %vm28, %v11123, 0
  %v11270 = vsel %vm28, %v11124, 0
  %v11273 = vsel %vm28, %v11125, 0
  %v11276 = vsel %vm28, %v11126, 0
  %v11279 = vsel %vm28, %v11127, 0
  %v11282 = vsel %vm28, %v11128, 0
  %v11285 = vsel %vm28, %v11129, 0
  %v11288 = vsel %vm28, %v11130, 0
  %v11291 = vsel %vm28, %v11131, 0
  %v11294 = vsel %vm28, %v11132, 0
  %v11297 = vsel %vm28, %v11133, 0
  %v11300 = vsel %vm28, %v11134, 0
  %v11303 = vsel %vm28, %v11135, 0
  %v11306 = vsel %vm28, %v11136, 0
  %v11309 = vsel %vm28, %v11137, 0
  %v11312 = vsel %vm28, %v11138, 0
  %v11315 = vsel %vm28, %v11139, 0
  %v11318 = vsel %vm28, %v11140, 0
  %v11321 = vsel %vm28, %v11141, 0
  %v11324 = vsel %vm28, %v11142, 0
  %v11327 = vsel %vm28, %v11143, 0
  %v11330 = vsel %vm28, %v11144, 0
  %v11333 = vsel %vm28, %v11145, 0
  %v11336 = vsel %vm28, %v11146, 0
  %v11339 = vsel %vm28, %v11147, 0
  %11341 = vmatprep.subr.mxu0 0.0
  %11342 = vmatpush1.msra.mxu0 %v11148
  %11343 = vmatprep.subr.mxu0 0.0
  %11344 = vmatpush1.msra.mxu0 0.0
  %11345 = vmatprep.subr.mxu0 0.0
  %11346 = vmatpush1.msra.mxu0 0.0
  %11347 = vmatprep.subr.mxu0 0.0
  %11348 = vmatpush1.msra.mxu0 0.0
  %11349 = vmatprep.subr.mxu0 0.0
  %11350 = vmatpush1.msra.mxu0 0.0
  %11351 = vmatprep.subr.mxu0 0.0
  %11352 = vmatpush1.msra.mxu0 0.0
  %11353 = vmatprep.subr.mxu0 0.0
  %11354 = vmatpush1.msra.mxu0 0.0
  %11355 = vmatprep.subr.mxu0 0.0
  %11356 = vmatpush1.msra.mxu0 0.0
  %11357 = vmatprep.subr.mxu0 0.0
  %11358 = vmatpush1.msra.mxu0 0.0
  %11359 = vmatprep.subr.mxu0 0.0
  %11360 = vmatpush1.msra.mxu0 0.0
  %11361 = vmatprep.subr.mxu0 0.0
  %11362 = vmatpush1.msra.mxu0 0.0
  %11363 = vmatprep.subr.mxu0 0.0
  %11364 = vmatpush1.msra.mxu0 0.0
  %11365 = vmatprep.subr.mxu0 0.0
  %11366 = vmatpush1.msra.mxu0 0.0
  %11367 = vmatprep.subr.mxu0 0.0
  %11368 = vmatpush1.msra.mxu0 0.0
  %11369 = vmatprep.subr.mxu0 0.0
  %11370 = vmatpush1.msra.mxu0 0.0
  %11371 = vmatprep.subr.mxu0 0.0
  %11372 = vmatpush1.msra.mxu0 0.0
  %11373 = vmatprep.subr.mxu0 0.0
  %11374 = vmatpush1.msra.mxu0 0.0
  %11375 = vmatprep.subr.mxu0 0.0
  %11376 = vmatpush1.msra.mxu0 0.0
  %11377 = vmatprep.subr.mxu0 0.0
  %11378 = vmatpush1.msra.mxu0 0.0
  %11379 = vmatprep.subr.mxu0 0.0
  %11380 = vmatpush1.msra.mxu0 0.0
  %11381 = vmatprep.subr.mxu0 0.0
  %11382 = vmatpush1.msra.mxu0 0.0
  %11383 = vmatprep.subr.mxu0 0.0
  %11384 = vmatpush1.msra.mxu0 0.0
  %11385 = vmatprep.subr.mxu0 0.0
  %11386 = vmatpush1.msra.mxu0 0.0
  %11387 = vmatprep.subr.mxu0 0.0
  %11388 = vmatpush1.msra.mxu0 0.0
  %11389 = vmatprep.subr.mxu0 0.0
  %11390 = vmatpush1.msra.mxu0 0.0
  %11391 = vmatprep.subr.mxu0 0.0
  %11392 = vmatpush1.msra.mxu0 0.0
  %11393 = vmatprep.subr.mxu0 0.0
  %11394 = vmatpush1.msra.mxu0 0.0
  %11395 = vmatprep.subr.mxu0 0.0
  %11396 = vmatpush1.msra.mxu0 0.0
  %11397 = vmatprep.subr.mxu0 0.0
  %11398 = vmatpush1.msra.mxu0 0.0
  %11399 = vmatprep.subr.mxu0 0.0
  %11400 = vmatpush1.msra.mxu0 0.0
  %11401 = vmatprep.subr.mxu0 0.0
  %11402 = vmatpush1.msra.mxu0 0.0
  %11403 = vmatprep.subr.mxu0 0.0
  %11404 = vmatpush1.msra.mxu0 0.0
  %11405 = vmatprep.mubr.f32.mxu0 0.0
  %11406 = vmatmul.mubr.f32.gmra.mrb[0].mxu0 %v11150
  %v11407 = vpop.f32.mrb[0].mxu0
  %v11408 = vadd.f32 0.0, %v11407
  %v11409 = vpop.f32.mrb[0].mxu0
  %11410 = vmatprep.mubr.f32.mxu0 0.0
  %11411 = vmatmul.mubr.f32.gmra.mrb[0].mxu0 %v11153
  %v11412 = vpop.f32.mrb[0].mxu0
  %v11413 = vadd.f32 0.0, %v11412
  %v11414 = vpop.f32.mrb[0].mxu0
  %11415 = vmatprep.mubr.f32.mxu0 0.0
  %11416 = vmatmul.mubr.f32.gmra.mrb[0].mxu0 %v11156
  %v11417 = vpop.f32.mrb[0].mxu0
  %v11418 = vadd.f32 0.0, %v11417
  %v11419 = vpop.f32.mrb[0].mxu0
  %11420 = vmatprep.mubr.f32.mxu0 0.0
  %11421 = vmatmul.mubr.f32.gmra.mrb[0].mxu0 %v11159
  %v11422 = vpop.f32.mrb[0].mxu0
  %v11423 = vadd.f32 0.0, %v11422
  %v11424 = vpop.f32.mrb[0].mxu0
  %11425 = vmatprep.mubr.f32.mxu0 0.0
  %11426 = vmatmul.mubr.f32.gmra.mrb[0].mxu0 %v11162
  %v11427 = vpop.f32.mrb[0].mxu0
  %v11428 = vadd.f32 0.0, %v11427
  %v11429 = vpop.f32.mrb[0].mxu0
  %11430 = vmatprep.mubr.f32.mxu0 0.0
  %11431 = vmatmul.mubr.f32.gmra.mrb[0].mxu0 %v11165
  %v11432 = vpop.f32.mrb[0].mxu0
  %v11433 = vadd.f32 0.0, %v11432
  %v11434 = vpop.f32.mrb[0].mxu0
  %11435 = vmatprep.mubr.f32.mxu0 0.0
  %11436 = vmatmul.mubr.f32.gmra.mrb[0].mxu0 %v11168
  %v11437 = vpop.f32.mrb[0].mxu0
  %v11438 = vadd.f32 0.0, %v11437
  %v11439 = vpop.f32.mrb[0].mxu0
  %11440 = vmatprep.mubr.f32.mxu0 0.0
  %11441 = vmatmul.mubr.f32.gmra.mrb[0].mxu0 %v11171
  %v11442 = vpop.f32.mrb[0].mxu0
  %v11443 = vadd.f32 0.0, %v11442
  %v11444 = vpop.f32.mrb[0].mxu0
  %11445 = vmatprep.mubr.f32.mxu0 0.0
  %11446 = vmatmul.mubr.f32.gmra.mrb[0].mxu0 %v11174
  %v11447 = vpop.f32.mrb[0].mxu0
  %v11448 = vadd.f32 0.0, %v11447
  %v11449 = vpop.f32.mrb[0].mxu0
  %11450 = vmatprep.mubr.f32.mxu0 0.0
  %11451 = vmatmul.mubr.f32.gmra.mrb[0].mxu0 %v11177
  %v11452 = vpop.f32.mrb[0].mxu0
  %v11453 = vadd.f32 0.0, %v11452
  %v11454 = vpop.f32.mrb[0].mxu0
  %11455 = vmatprep.mubr.f32.mxu0 0.0
  %11456 = vmatmul.mubr.f32.gmra.mrb[0].mxu0 %v11180
  %v11457 = vpop.f32.mrb[0].mxu0
  %v11458 = vadd.f32 0.0, %v11457
  %v11459 = vpop.f32.mrb[0].mxu0
  %11460 = vmatprep.mubr.f32.mxu0 0.0
  %11461 = vmatmul.mubr.f32.gmra.mrb[0].mxu0 %v11183
  %v11462 = vpop.f32.mrb[0].mxu0
  %v11463 = vadd.f32 0.0, %v11462
  %v11464 = vpop.f32.mrb[0].mxu0
  %11465 = vmatprep.mubr.f32.mxu0 0.0
  %11466 = vmatmul.mubr.f32.gmra.mrb[0].mxu0 %v11186
  %v11467 = vpop.f32.mrb[0].mxu0
  %v11468 = vadd.f32 0.0, %v11467
  %v11469 = vpop.f32.mrb[0].mxu0
  %11470 = vmatprep.mubr.f32.mxu0 0.0
  %11471 = vmatmul.mubr.f32.gmra.mrb[0].mxu0 %v11189
  %v11472 = vpop.f32.mrb[0].mxu0
  %v11473 = vadd.f32 0.0, %v11472
  %v11474 = vpop.f32.mrb[0].mxu0
  %11475 = vmatprep.mubr.f32.mxu0 0.0
  %11476 = vmatmul.mubr.f32.gmra.mrb[0].mxu0 %v11192
  %v11477 = vpop.f32.mrb[0].mxu0
  %v11478 = vadd.f32 0.0, %v11477
  %v11479 = vpop.f32.mrb[0].mxu0
  %11480 = vmatprep.mubr.f32.mxu0 0.0
  %11481 = vmatmul.mubr.f32.gmra.mrb[0].mxu0 %v11195
  %v11482 = vpop.f32.mrb[0].mxu0
  %v11483 = vadd.f32 0.0, %v11482
  %v11484 = vpop.f32.mrb[0].mxu0
  %11485 = vmatprep.mubr.f32.mxu0 0.0
  %11486 = vmatmul.mubr.f32.gmra.mrb[0].mxu0 %v11198
  %v11487 = vpop.f32.mrb[0].mxu0
  %v11488 = vadd.f32 0.0, %v11487
  %v11489 = vpop.f32.mrb[0].mxu0
  %11490 = vmatprep.mubr.f32.mxu0 0.0
  %11491 = vmatmul.mubr.f32.gmra.mrb[0].mxu0 %v11201
  %v11492 = vpop.f32.mrb[0].mxu0
  %v11493 = vadd.f32 0.0, %v11492
  %v11494 = vpop.f32.mrb[0].mxu0
  %11495 = vmatprep.mubr.f32.mxu0 0.0
  %11496 = vmatmul.mubr.f32.gmra.mrb[0].mxu0 %v11204
  %v11497 = vpop.f32.mrb[0].mxu0
  %v11498 = vadd.f32 0.0, %v11497
  %v11499 = vpop.f32.mrb[0].mxu0
  %11500 = vmatprep.mubr.f32.mxu0 0.0
  %11501 = vmatmul.mubr.f32.gmra.mrb[0].mxu0 %v11207
  %v11502 = vpop.f32.mrb[0].mxu0
  %v11503 = vadd.f32 0.0, %v11502
  %v11504 = vpop.f32.mrb[0].mxu0
  %11505 = vmatprep.mubr.f32.mxu0 0.0
  %11506 = vmatmul.mubr.f32.gmra.mrb[0].mxu0 %v11210
  %v11507 = vpop.f32.mrb[0].mxu0
  %v11508 = vadd.f32 0.0, %v11507
  %v11509 = vpop.f32.mrb[0].mxu0
  %11510 = vmatprep.mubr.f32.mxu0 0.0
  %11511 = vmatmul.mubr.f32.gmra.mrb[0].mxu0 %v11213
  %v11512 = vpop.f32.mrb[0].mxu0
  %v11513 = vadd.f32 0.0, %v11512
  %v11514 = vpop.f32.mrb[0].mxu0
  %11515 = vmatprep.mubr.f32.mxu0 0.0
  %11516 = vmatmul.mubr.f32.gmra.mrb[0].mxu0 %v11216
  %v11517 = vpop.f32.mrb[0].mxu0
  %v11518 = vadd.f32 0.0, %v11517
  %v11519 = vpop.f32.mrb[0].mxu0
  %11520 = vmatprep.mubr.f32.mxu0 0.0
  %11521 = vmatmul.mubr.f32.gmra.mrb[0].mxu0 %v11219
  %v11522 = vpop.f32.mrb[0].mxu0
  %v11523 = vadd.f32 0.0, %v11522
  %v11524 = vpop.f32.mrb[0].mxu0
  %11525 = vmatprep.mubr.f32.mxu0 0.0
  %11526 = vmatmul.mubr.f32.gmra.mrb[0].mxu0 %v11222
  %v11527 = vpop.f32.mrb[0].mxu0
  %v11528 = vadd.f32 0.0, %v11527
  %v11529 = vpop.f32.mrb[0].mxu0
  %11530 = vmatprep.mubr.f32.mxu0 0.0
  %11531 = vmatmul.mubr.f32.gmra.mrb[0].mxu0 %v11225
  %v11532 = vpop.f32.mrb[0].mxu0
  %v11533 = vadd.f32 0.0, %v11532
  %v11534 = vpop.f32.mrb[0].mxu0
  %11535 = vmatprep.mubr.f32.mxu0 0.0
  %11536 = vmatmul.mubr.f32.gmra.mrb[0].mxu0 %v11228
  %v11537 = vpop.f32.mrb[0].mxu0
  %v11538 = vadd.f32 0.0, %v11537
  %v11539 = vpop.f32.mrb[0].mxu0
  %11540 = vmatprep.mubr.f32.mxu0 0.0
  %11541 = vmatmul.mubr.f32.gmra.mrb[0].mxu0 %v11231
  %v11542 = vpop.f32.mrb[0].mxu0
  %v11543 = vadd.f32 0.0, %v11542
  %v11544 = vpop.f32.mrb[0].mxu0
  %11545 = vmatprep.mubr.f32.mxu0 0.0
  %11546 = vmatmul.mubr.f32.gmra.mrb[0].mxu0 %v11234
  %v11547 = vpop.f32.mrb[0].mxu0
  %v11548 = vadd.f32 0.0, %v11547
  %v11549 = vpop.f32.mrb[0].mxu0
  %11550 = vmatprep.mubr.f32.mxu0 0.0
  %11551 = vmatmul.mubr.f32.gmra.mrb[0].mxu0 %v11237
  %v11552 = vpop.f32.mrb[0].mxu0
  %v11553 = vadd.f32 0.0, %v11552
  %v11554 = vpop.f32.mrb[0].mxu0
  %11555 = vmatprep.mubr.f32.mxu0 0.0
  %11556 = vmatmul.mubr.f32.gmra.mrb[0].mxu0 %v11240
  %v11557 = vpop.f32.mrb[0].mxu0
  %v11558 = vadd.f32 0.0, %v11557
  %v11559 = vpop.f32.mrb[0].mxu0
  %11560 = vmatprep.mubr.f32.mxu0 0.0
  %11561 = vmatmul.mubr.f32.gmra.mrb[0].mxu0 %v11243
  %v11562 = vpop.f32.mrb[0].mxu0
  %v11563 = vadd.f32 0.0, %v11562
  %v11564 = vpop.f32.mrb[0].mxu0
  %11565 = vmatprep.mubr.f32.mxu0 0.0
  %11566 = vmatmul.mubr.f32.gmra.mrb[0].mxu0 %v11246
  %v11567 = vpop.f32.mrb[0].mxu0
  %v11568 = vadd.f32 0.0, %v11567
  %v11569 = vpop.f32.mrb[0].mxu0
  %11570 = vmatprep.mubr.f32.mxu0 0.0
  %11571 = vmatmul.mubr.f32.gmra.mrb[0].mxu0 %v11249
  %v11572 = vpop.f32.mrb[0].mxu0
  %v11573 = vadd.f32 0.0, %v11572
  %v11574 = vpop.f32.mrb[0].mxu0
  %11575 = vmatprep.mubr.f32.mxu0 0.0
  %11576 = vmatmul.mubr.f32.gmra.mrb[0].mxu0 %v11252
  %v11577 = vpop.f32.mrb[0].mxu0
  %v11578 = vadd.f32 0.0, %v11577
  %v11579 = vpop.f32.mrb[0].mxu0
  %11580 = vmatprep.mubr.f32.mxu0 0.0
  %11581 = vmatmul.mubr.f32.gmra.mrb[0].mxu0 %v11255
  %v11582 = vpop.f32.mrb[0].mxu0
  %v11583 = vadd.f32 0.0, %v11582
  %v11584 = vpop.f32.mrb[0].mxu0
  %11585 = vmatprep.mubr.f32.mxu0 0.0
  %11586 = vmatmul.mubr.f32.gmra.mrb[0].mxu0 %v11258
  %v11587 = vpop.f32.mrb[0].mxu0
  %v11588 = vadd.f32 0.0, %v11587
  %v11589 = vpop.f32.mrb[0].mxu0
  %11590 = vmatprep.mubr.f32.mxu0 0.0
  %11591 = vmatmul.mubr.f32.gmra.mrb[0].mxu0 %v11261
  %v11592 = vpop.f32.mrb[0].mxu0
  %v11593 = vadd.f32 0.0, %v11592
  %v11594 = vpop.f32.mrb[0].mxu0
  %11595 = vmatprep.mubr.f32.mxu0 0.0
  %11596 = vmatmul.mubr.f32.gmra.mrb[0].mxu0 %v11264
  %v11597 = vpop.f32.mrb[0].mxu0
  %v11598 = vadd.f32 0.0, %v11597
  %v11599 = vpop.f32.mrb[0].mxu0
  %11600 = vmatprep.mubr.f32.mxu0 0.0
  %11601 = vmatmul.mubr.f32.gmra.mrb[0].mxu0 %v11267
  %v11602 = vpop.f32.mrb[0].mxu0
  %v11603 = vadd.f32 0.0, %v11602
  %v11604 = vpop.f32.mrb[0].mxu0
  %11605 = vmatprep.mubr.f32.mxu0 0.0
  %11606 = vmatmul.mubr.f32.gmra.mrb[0].mxu0 %v11270
  %v11607 = vpop.f32.mrb[0].mxu0
  %v11608 = vadd.f32 0.0, %v11607
  %v11609 = vpop.f32.mrb[0].mxu0
  %11610 = vmatprep.mubr.f32.mxu0 0.0
  %11611 = vmatmul.mubr.f32.gmra.mrb[0].mxu0 %v11273
  %v11612 = vpop.f32.mrb[0].mxu0
  %v11613 = vadd.f32 0.0, %v11612
  %v11614 = vpop.f32.mrb[0].mxu0
  %11615 = vmatprep.mubr.f32.mxu0 0.0
  %11616 = vmatmul.mubr.f32.gmra.mrb[0].mxu0 %v11276
  %v11617 = vpop.f32.mrb[0].mxu0
  %v11618 = vadd.f32 0.0, %v11617
  %v11619 = vpop.f32.mrb[0].mxu0
  %11620 = vmatprep.mubr.f32.mxu0 0.0
  %11621 = vmatmul.mubr.f32.gmra.mrb[0].mxu0 %v11279
  %v11622 = vpop.f32.mrb[0].mxu0
  %v11623 = vadd.f32 0.0, %v11622
  %v11624 = vpop.f32.mrb[0].mxu0
  %11625 = vmatprep.mubr.f32.mxu0 0.0
  %11626 = vmatmul.mubr.f32.gmra.mrb[0].mxu0 %v11282
  %v11627 = vpop.f32.mrb[0].mxu0
  %v11628 = vadd.f32 0.0, %v11627
  %v11629 = vpop.f32.mrb[0].mxu0
  %11630 = vmatprep.mubr.f32.mxu0 0.0
  %11631 = vmatmul.mubr.f32.gmra.mrb[0].mxu0 %v11285
  %v11632 = vpop.f32.mrb[0].mxu0
  %v11633 = vadd.f32 0.0, %v11632
  %v11634 = vpop.f32.mrb[0].mxu0
  %11635 = vmatprep.mubr.f32.mxu0 0.0
  %11636 = vmatmul.mubr.f32.gmra.mrb[0].mxu0 %v11288
  %v11637 = vpop.f32.mrb[0].mxu0
  %v11638 = vadd.f32 0.0, %v11637
  %v11639 = vpop.f32.mrb[0].mxu0
  %11640 = vmatprep.mubr.f32.mxu0 0.0
  %11641 = vmatmul.mubr.f32.gmra.mrb[0].mxu0 %v11291
  %v11642 = vpop.f32.mrb[0].mxu0
  %v11643 = vadd.f32 0.0, %v11642
  %v11644 = vpop.f32.mrb[0].mxu0
  %11645 = vmatprep.mubr.f32.mxu0 0.0
  %11646 = vmatmul.mubr.f32.gmra.mrb[0].mxu0 %v11294
  %v11647 = vpop.f32.mrb[0].mxu0
  %v11648 = vadd.f32 0.0, %v11647
  %v11649 = vpop.f32.mrb[0].mxu0
  %11650 = vmatprep.mubr.f32.mxu0 0.0
  %11651 = vmatmul.mubr.f32.gmra.mrb[0].mxu0 %v11297
  %v11652 = vpop.f32.mrb[0].mxu0
  %v11653 = vadd.f32 0.0, %v11652
  %v11654 = vpop.f32.mrb[0].mxu0
  %11655 = vmatprep.mubr.f32.mxu0 0.0
  %11656 = vmatmul.mubr.f32.gmra.mrb[0].mxu0 %v11300
  %v11657 = vpop.f32.mrb[0].mxu0
  %v11658 = vadd.f32 0.0, %v11657
  %v11659 = vpop.f32.mrb[0].mxu0
  %11660 = vmatprep.mubr.f32.mxu0 0.0
  %11661 = vmatmul.mubr.f32.gmra.mrb[0].mxu0 %v11303
  %v11662 = vpop.f32.mrb[0].mxu0
  %v11663 = vadd.f32 0.0, %v11662
  %v11664 = vpop.f32.mrb[0].mxu0
  %11665 = vmatprep.mubr.f32.mxu0 0.0
  %11666 = vmatmul.mubr.f32.gmra.mrb[0].mxu0 %v11306
  %v11667 = vpop.f32.mrb[0].mxu0
  %v11668 = vadd.f32 0.0, %v11667
  %v11669 = vpop.f32.mrb[0].mxu0
  %11670 = vmatprep.mubr.f32.mxu0 0.0
  %11671 = vmatmul.mubr.f32.gmra.mrb[0].mxu0 %v11309
  %v11672 = vpop.f32.mrb[0].mxu0
  %v11673 = vadd.f32 0.0, %v11672
  %v11674 = vpop.f32.mrb[0].mxu0
  %11675 = vmatprep.mubr.f32.mxu0 0.0
  %11676 = vmatmul.mubr.f32.gmra.mrb[0].mxu0 %v11312
  %v11677 = vpop.f32.mrb[0].mxu0
  %v11678 = vadd.f32 0.0, %v11677
  %v11679 = vpop.f32.mrb[0].mxu0
  %11680 = vmatprep.mubr.f32.mxu0 0.0
  %11681 = vmatmul.mubr.f32.gmra.mrb[0].mxu0 %v11315
  %v11682 = vpop.f32.mrb[0].mxu0
  %v11683 = vadd.f32 0.0, %v11682
  %v11684 = vpop.f32.mrb[0].mxu0
  %11685 = vmatprep.mubr.f32.mxu0 0.0
  %11686 = vmatmul.mubr.f32.gmra.mrb[0].mxu0 %v11318
  %v11687 = vpop.f32.mrb[0].mxu0
  %v11688 = vadd.f32 0.0, %v11687
  %v11689 = vpop.f32.mrb[0].mxu0
  %11690 = vmatprep.mubr.f32.mxu0 0.0
  %11691 = vmatmul.mubr.f32.gmra.mrb[0].mxu0 %v11321
  %v11692 = vpop.f32.mrb[0].mxu0
  %v11693 = vadd.f32 0.0, %v11692
  %v11694 = vpop.f32.mrb[0].mxu0
  %11695 = vmatprep.mubr.f32.mxu0 0.0
  %11696 = vmatmul.mubr.f32.gmra.mrb[0].mxu0 %v11324
  %v11697 = vpop.f32.mrb[0].mxu0
  %v11698 = vadd.f32 0.0, %v11697
  %v11699 = vpop.f32.mrb[0].mxu0
  %11700 = vmatprep.mubr.f32.mxu0 0.0
  %11701 = vmatmul.mubr.f32.gmra.mrb[0].mxu0 %v11327
  %v11702 = vpop.f32.mrb[0].mxu0
  %v11703 = vadd.f32 0.0, %v11702
  %v11704 = vpop.f32.mrb[0].mxu0
  %11705 = vmatprep.mubr.f32.mxu0 0.0
  %11706 = vmatmul.mubr.f32.gmra.mrb[0].mxu0 %v11330
  %v11707 = vpop.f32.mrb[0].mxu0
  %v11708 = vadd.f32 0.0, %v11707
  %v11709 = vpop.f32.mrb[0].mxu0
  %11710 = vmatprep.mubr.f32.mxu0 0.0
  %11711 = vmatmul.mubr.f32.gmra.mrb[0].mxu0 %v11333
  %v11712 = vpop.f32.mrb[0].mxu0
  %v11713 = vadd.f32 0.0, %v11712
  %v11714 = vpop.f32.mrb[0].mxu0
  %11715 = vmatprep.mubr.f32.mxu0 0.0
  %11716 = vmatmul.mubr.f32.gmra.mrb[0].mxu0 %v11336
  %v11717 = vpop.f32.mrb[0].mxu0
  %v11718 = vadd.f32 0.0, %v11717
  %v11719 = vpop.f32.mrb[0].mxu0
  %11720 = vmatprep.mubr.f32.mxu0 0.0
  %11721 = vmatmul.mubr.f32.gmra.mrb[0].mxu0 %v11339
  %v11722 = vpop.f32.mrb[0].mxu0
  %v11723 = vadd.f32 0.0, %v11722
  %v11724 = vpop.f32.mrb[0].mxu0
  %11725 = vdwg.mxu0
  %v11726 = vadd.f32 %v11020, %v11408
  %v11727 = vadd.f32 %v11021, %v11413
  %v11728 = vadd.f32 %v11022, %v11418
  %v11729 = vadd.f32 %v11023, %v11423
  %v11730 = vadd.f32 %v11024, %v11428
  %v11731 = vadd.f32 %v11025, %v11433
  %v11732 = vadd.f32 %v11026, %v11438
  %v11733 = vadd.f32 %v11027, %v11443
  %v11734 = vadd.f32 %v11028, %v11448
  %v11735 = vadd.f32 %v11029, %v11453
  %v11736 = vadd.f32 %v11030, %v11458
  %v11737 = vadd.f32 %v11031, %v11463
  %v11738 = vadd.f32 %v11032, %v11468
  %v11739 = vadd.f32 %v11033, %v11473
  %v11740 = vadd.f32 %v11034, %v11478
  %v11741 = vadd.f32 %v11035, %v11483
  %v11742 = vadd.f32 %v11036, %v11488
  %v11743 = vadd.f32 %v11037, %v11493
  %v11744 = vadd.f32 %v11038, %v11498
  %v11745 = vadd.f32 %v11039, %v11503
  %v11746 = vadd.f32 %v11040, %v11508
  %v11747 = vadd.f32 %v11041, %v11513
  %v11748 = vadd.f32 %v11042, %v11518
  %v11749 = vadd.f32 %v11043, %v11523
  %v11750 = vadd.f32 %v11044, %v11528
  %v11751 = vadd.f32 %v11045, %v11533
  %v11752 = vadd.f32 %v11046, %v11538
  %v11753 = vadd.f32 %v11047, %v11543
  %v11754 = vadd.f32 %v11048, %v11548
  %v11755 = vadd.f32 %v11049, %v11553
  %v11756 = vadd.f32 %v11050, %v11558
  %v11757 = vadd.f32 %v11051, %v11563
  %v11758 = vadd.f32 %v11052, %v11568
  %v11759 = vadd.f32 %v11053, %v11573
  %v11760 = vadd.f32 %v11054, %v11578
  %v11761 = vadd.f32 %v11055, %v11583
  %v11762 = vadd.f32 %v11056, %v11588
  %v11763 = vadd.f32 %v11057, %v11593
  %v11764 = vadd.f32 %v11058, %v11598
  %v11765 = vadd.f32 %v11059, %v11603
  %v11766 = vadd.f32 %v11060, %v11608
  %v11767 = vadd.f32 %v11061, %v11613
  %v11768 = vadd.f32 %v11062, %v11618
  %v11769 = vadd.f32 %v11063, %v11623
  %v11770 = vadd.f32 %v11064, %v11628
  %v11771 = vadd.f32 %v11065, %v11633
  %v11772 = vadd.f32 %v11066, %v11638
  %v11773 = vadd.f32 %v11067, %v11643
  %v11774 = vadd.f32 %v11068, %v11648
  %v11775 = vadd.f32 %v11069, %v11653
  %v11776 = vadd.f32 %v11070, %v11658
  %v11777 = vadd.f32 %v11071, %v11663
  %v11778 = vadd.f32 %v11072, %v11668
  %v11779 = vadd.f32 %v11073, %v11673
  %v11780 = vadd.f32 %v11074, %v11678
  %v11781 = vadd.f32 %v11075, %v11683
  %v11782 = vadd.f32 %v11076, %v11688
  %v11783 = vadd.f32 %v11077, %v11693
  %v11784 = vadd.f32 %v11078, %v11698
  %v11785 = vadd.f32 %v11079, %v11703
  %v11786 = vadd.f32 %v11080, %v11708
  %v11787 = vadd.f32 %v11081, %v11713
  %v11788 = vadd.f32 %v11082, %v11718
  %v11789 = vadd.f32 %v11083, %v11723
  %v11790 = vld [vmem:[%s4377 + $0x1] sm:$0xff]
  %v11791 = vld [vmem:[%s4377 + $0x9] sm:$0xff]
  %v11792 = vld [vmem:[%s4377 + $0x19] sm:$0xff]
  %v11793 = vld [vmem:[%s4377 + $0x21] sm:$0xff]
  %v11794 = vld [vmem:[%s4377 + $0x31] sm:$0xff]
  %v11795 = vld [vmem:[%s4377 + $0x39] sm:$0xff]
  %v11796 = vld [vmem:[%s4377 + $0x49] sm:$0xff]
  %v11797 = vld [vmem:[%s4377 + $0x51] sm:$0xff]
  %v11798 = vld [vmem:[%s4377 + $0x61] sm:$0xff]
  %v11799 = vld [vmem:[%s4377 + $0x69] sm:$0xff]
  %v11800 = vld [vmem:[%s4377 + $0x79] sm:$0xff]
  %v11801 = vld [vmem:[%s4377 + $0x81] sm:$0xff]
  %v11802 = vld [vmem:[%s4377 + $0x91] sm:$0xff]
  %v11803 = vld [vmem:[%s4377 + $0x99] sm:$0xff]
  %v11804 = vld [vmem:[%s4377 + $0xa9] sm:$0xff]
  %v11805 = vld [vmem:[%s4377 + $0xb1] sm:$0xff]
  %v11806 = vld [vmem:[%s4377 + $0xc1] sm:$0xff]
  %v11807 = vld [vmem:[%s4377 + $0xc9] sm:$0xff]
  %v11808 = vld [vmem:[%s4377 + $0xd9] sm:$0xff]
  %v11809 = vld [vmem:[%s4377 + $0xe1] sm:$0xff]
  %v11810 = vld [vmem:[%s4377 + $0xf1] sm:$0xff]
  %v11811 = vld [vmem:[%s4377 + $0xf9] sm:$0xff]
  %v11812 = vld [vmem:[%s4377 + $0x109] sm:$0xff]
  %v11813 = vld [vmem:[%s4377 + $0x111] sm:$0xff]
  %v11814 = vld [vmem:[%s4377 + $0x121] sm:$0xff]
  %v11815 = vld [vmem:[%s4377 + $0x129] sm:$0xff]
  %v11816 = vld [vmem:[%s4377 + $0x139] sm:$0xff]
  %v11817 = vld [vmem:[%s4377 + $0x141] sm:$0xff]
  %v11818 = vld [vmem:[%s4377 + $0x151] sm:$0xff]
  %v11819 = vld [vmem:[%s4377 + $0x159] sm:$0xff]
  %v11820 = vld [vmem:[%s4377 + $0x169] sm:$0xff]
  %v11821 = vld [vmem:[%s4377 + $0x171] sm:$0xff]
  %v11822 = vld [vmem:[%s4377 + $0x1b1] sm:$0xff]
  %v11823 = vld [vmem:[%s4377 + $0x1b9] sm:$0xff]
  %v11824 = vld [vmem:[%s4377 + $0x1c9] sm:$0xff]
  %v11825 = vld [vmem:[%s4377 + $0x1d1] sm:$0xff]
  %v11826 = vld [vmem:[%s4377 + $0x1e1] sm:$0xff]
  %v11827 = vld [vmem:[%s4377 + $0x1e9] sm:$0xff]
  %v11828 = vld [vmem:[%s4377 + $0x1f9] sm:$0xff]
  %v11829 = vld [vmem:[%s4377 + $0x201] sm:$0xff]
  %v11830 = vld [vmem:[%s4377 + $0x211] sm:$0xff]
  %v11831 = vld [vmem:[%s4377 + $0x219] sm:$0xff]
  %v11832 = vld [vmem:[%s4377 + $0x229] sm:$0xff]
  %v11833 = vld [vmem:[%s4377 + $0x231] sm:$0xff]
  %v11834 = vld [vmem:[%s4377 + $0x241] sm:$0xff]
  %v11835 = vld [vmem:[%s4377 + $0x249] sm:$0xff]
  %v11836 = vld [vmem:[%s4377 + $0x259] sm:$0xff]
  %v11837 = vld [vmem:[%s4377 + $0x261] sm:$0xff]
  %v11838 = vld [vmem:[%s4377 + $0x271] sm:$0xff]
  %v11839 = vld [vmem:[%s4377 + $0x279] sm:$0xff]
  %v11840 = vld [vmem:[%s4377 + $0x289] sm:$0xff]
  %v11841 = vld [vmem:[%s4377 + $0x291] sm:$0xff]
  %v11842 = vld [vmem:[%s4377 + $0x2a1] sm:$0xff]
  %v11843 = vld [vmem:[%s4377 + $0x2a9] sm:$0xff]
  %v11844 = vld [vmem:[%s4377 + $0x2b9] sm:$0xff]
  %v11845 = vld [vmem:[%s4377 + $0x2c1] sm:$0xff]
  %v11846 = vld [vmem:[%s4377 + $0x2d1] sm:$0xff]
  %v11847 = vld [vmem:[%s4377 + $0x2d9] sm:$0xff]
  %v11848 = vld [vmem:[%s4377 + $0x2e9] sm:$0xff]
  %v11849 = vld [vmem:[%s4377 + $0x2f1] sm:$0xff]
  %v11850 = vld [vmem:[%s4377 + $0x301] sm:$0xff]
  %v11851 = vld [vmem:[%s4377 + $0x309] sm:$0xff]
  %v11852 = vld [vmem:[%s4377 + $0x319] sm:$0xff]
  %v11853 = vld [vmem:[%s4377 + $0x321] sm:$0xff]
  %v11854 = vld [vmem:[%s2 + $0x38] sm:$0xff]
  %v11856 = vsel %vm28, %v11790, 0
  %v11859 = vsel %vm28, %v11791, 0
  %v11862 = vsel %vm28, %v11792, 0
  %v11865 = vsel %vm28, %v11793, 0
  %v11868 = vsel %vm28, %v11794, 0
  %v11871 = vsel %vm28, %v11795, 0
  %v11874 = vsel %vm28, %v11796, 0
  %v11877 = vsel %vm28, %v11797, 0
  %v11880 = vsel %vm28, %v11798, 0
  %v11883 = vsel %vm28, %v11799, 0
  %v11886 = vsel %vm28, %v11800, 0
  %v11889 = vsel %vm28, %v11801, 0
  %v11892 = vsel %vm28, %v11802, 0
  %v11895 = vsel %vm28, %v11803, 0
  %v11898 = vsel %vm28, %v11804, 0
  %v11901 = vsel %vm28, %v11805, 0
  %v11904 = vsel %vm28, %v11806, 0
  %v11907 = vsel %vm28, %v11807, 0
  %v11910 = vsel %vm28, %v11808, 0
  %v11913 = vsel %vm28, %v11809, 0
  %v11916 = vsel %vm28, %v11810, 0
  %v11919 = vsel %vm28, %v11811, 0
  %v11922 = vsel %vm28, %v11812, 0
  %v11925 = vsel %vm28, %v11813, 0
  %v11928 = vsel %vm28, %v11814, 0
  %v11931 = vsel %vm28, %v11815, 0
  %v11934 = vsel %vm28, %v11816, 0
  %v11937 = vsel %vm28, %v11817, 0
  %v11940 = vsel %vm28, %v11818, 0
  %v11943 = vsel %vm28, %v11819, 0
  %v11946 = vsel %vm28, %v11820, 0
  %v11949 = vsel %vm28, %v11821, 0
  %v11952 = vsel %vm28, %v11822, 0
  %v11955 = vsel %vm28, %v11823, 0
  %v11958 = vsel %vm28, %v11824, 0
  %v11961 = vsel %vm28, %v11825, 0
  %v11964 = vsel %vm28, %v11826, 0
  %v11967 = vsel %vm28, %v11827, 0
  %v11970 = vsel %vm28, %v11828, 0
  %v11973 = vsel %vm28, %v11829, 0
  %v11976 = vsel %vm28, %v11830, 0
  %v11979 = vsel %vm28, %v11831, 0
  %v11982 = vsel %vm28, %v11832, 0
  %v11985 = vsel %vm28, %v11833, 0
  %v11988 = vsel %vm28, %v11834, 0
  %v11991 = vsel %vm28, %v11835, 0
  %v11994 = vsel %vm28, %v11836, 0
  %v11997 = vsel %vm28, %v11837, 0
  %v12000 = vsel %vm28, %v11838, 0
  %v12003 = vsel %vm28, %v11839, 0
  %v12006 = vsel %vm28, %v11840, 0
  %v12009 = vsel %vm28, %v11841, 0
  %v12012 = vsel %vm28, %v11842, 0
  %v12015 = vsel %vm28, %v11843, 0
  %v12018 = vsel %vm28, %v11844, 0
  %v12021 = vsel %vm28, %v11845, 0
  %v12024 = vsel %vm28, %v11846, 0
  %v12027 = vsel %vm28, %v11847, 0
  %v12030 = vsel %vm28, %v11848, 0
  %v12033 = vsel %vm28, %v11849, 0
  %v12036 = vsel %vm28, %v11850, 0
  %v12039 = vsel %vm28, %v11851, 0
  %v12042 = vsel %vm28, %v11852, 0
  %v12045 = vsel %vm28, %v11853, 0
  %12047 = vmatprep.subr.mxu0 0.0
  %12048 = vmatpush1.msra.mxu0 %v11854
  %12049 = vmatprep.subr.mxu0 0.0
  %12050 = vmatpush1.msra.mxu0 0.0
  %12051 = vmatprep.subr.mxu0 0.0
  %12052 = vmatpush1.msra.mxu0 0.0
  %12053 = vmatprep.subr.mxu0 0.0
  %12054 = vmatpush1.msra.mxu0 0.0
  %12055 = vmatprep.subr.mxu0 0.0
  %12056 = vmatpush1.msra.mxu0 0.0
  %12057 = vmatprep.subr.mxu0 0.0
  %12058 = vmatpush1.msra.mxu0 0.0
  %12059 = vmatprep.subr.mxu0 0.0
  %12060 = vmatpush1.msra.mxu0 0.0
  %12061 = vmatprep.subr.mxu0 0.0
  %12062 = vmatpush1.msra.mxu0 0.0
  %12063 = vmatprep.subr.mxu0 0.0
  %12064 = vmatpush1.msra.mxu0 0.0
  %12065 = vmatprep.subr.mxu0 0.0
  %12066 = vmatpush1.msra.mxu0 0.0
  %12067 = vmatprep.subr.mxu0 0.0
  %12068 = vmatpush1.msra.mxu0 0.0
  %12069 = vmatprep.subr.mxu0 0.0
  %12070 = vmatpush1.msra.mxu0 0.0
  %12071 = vmatprep.subr.mxu0 0.0
  %12072 = vmatpush1.msra.mxu0 0.0
  %12073 = vmatprep.subr.mxu0 0.0
  %12074 = vmatpush1.msra.mxu0 0.0
  %12075 = vmatprep.subr.mxu0 0.0
  %12076 = vmatpush1.msra.mxu0 0.0
  %12077 = vmatprep.subr.mxu0 0.0
  %12078 = vmatpush1.msra.mxu0 0.0
  %12079 = vmatprep.subr.mxu0 0.0
  %12080 = vmatpush1.msra.mxu0 0.0
  %12081 = vmatprep.subr.mxu0 0.0
  %12082 = vmatpush1.msra.mxu0 0.0
  %12083 = vmatprep.subr.mxu0 0.0
  %12084 = vmatpush1.msra.mxu0 0.0
  %12085 = vmatprep.subr.mxu0 0.0
  %12086 = vmatpush1.msra.mxu0 0.0
  %12087 = vmatprep.subr.mxu0 0.0
  %12088 = vmatpush1.msra.mxu0 0.0
  %12089 = vmatprep.subr.mxu0 0.0
  %12090 = vmatpush1.msra.mxu0 0.0
  %12091 = vmatprep.subr.mxu0 0.0
  %12092 = vmatpush1.msra.mxu0 0.0
  %12093 = vmatprep.subr.mxu0 0.0
  %12094 = vmatpush1.msra.mxu0 0.0
  %12095 = vmatprep.subr.mxu0 0.0
  %12096 = vmatpush1.msra.mxu0 0.0
  %12097 = vmatprep.subr.mxu0 0.0
  %12098 = vmatpush1.msra.mxu0 0.0
  %12099 = vmatprep.subr.mxu0 0.0
  %12100 = vmatpush1.msra.mxu0 0.0
  %12101 = vmatprep.subr.mxu0 0.0
  %12102 = vmatpush1.msra.mxu0 0.0
  %12103 = vmatprep.subr.mxu0 0.0
  %12104 = vmatpush1.msra.mxu0 0.0
  %12105 = vmatprep.subr.mxu0 0.0
  %12106 = vmatpush1.msra.mxu0 0.0
  %12107 = vmatprep.subr.mxu0 0.0
  %12108 = vmatpush1.msra.mxu0 0.0
  %12109 = vmatprep.subr.mxu0 0.0
  %12110 = vmatpush1.msra.mxu0 0.0
  %12111 = vmatprep.mubr.f32.mxu0 0.0
  %12112 = vmatmul.mubr.f32.gmra.mrb[0].mxu0 %v11856
  %v12113 = vpop.f32.mrb[0].mxu0
  %v12114 = vadd.f32 0.0, %v12113
  %v12115 = vpop.f32.mrb[0].mxu0
  %12116 = vmatprep.mubr.f32.mxu0 0.0
  %12117 = vmatmul.mubr.f32.gmra.mrb[0].mxu0 %v11859
  %v12118 = vpop.f32.mrb[0].mxu0
  %v12119 = vadd.f32 0.0, %v12118
  %v12120 = vpop.f32.mrb[0].mxu0
  %12121 = vmatprep.mubr.f32.mxu0 0.0
  %12122 = vmatmul.mubr.f32.gmra.mrb[0].mxu0 %v11862
  %v12123 = vpop.f32.mrb[0].mxu0
  %v12124 = vadd.f32 0.0, %v12123
  %v12125 = vpop.f32.mrb[0].mxu0
  %12126 = vmatprep.mubr.f32.mxu0 0.0
  %12127 = vmatmul.mubr.f32.gmra.mrb[0].mxu0 %v11865
  %v12128 = vpop.f32.mrb[0].mxu0
  %v12129 = vadd.f32 0.0, %v12128
  %v12130 = vpop.f32.mrb[0].mxu0
  %12131 = vmatprep.mubr.f32.mxu0 0.0
  %12132 = vmatmul.mubr.f32.gmra.mrb[0].mxu0 %v11868
  %v12133 = vpop.f32.mrb[0].mxu0
  %v12134 = vadd.f32 0.0, %v12133
  %v12135 = vpop.f32.mrb[0].mxu0
  %12136 = vmatprep.mubr.f32.mxu0 0.0
  %12137 = vmatmul.mubr.f32.gmra.mrb[0].mxu0 %v11871
  %v12138 = vpop.f32.mrb[0].mxu0
  %v12139 = vadd.f32 0.0, %v12138
  %v12140 = vpop.f32.mrb[0].mxu0
  %12141 = vmatprep.mubr.f32.mxu0 0.0
  %12142 = vmatmul.mubr.f32.gmra.mrb[0].mxu0 %v11874
  %v12143 = vpop.f32.mrb[0].mxu0
  %v12144 = vadd.f32 0.0, %v12143
  %v12145 = vpop.f32.mrb[0].mxu0
  %12146 = vmatprep.mubr.f32.mxu0 0.0
  %12147 = vmatmul.mubr.f32.gmra.mrb[0].mxu0 %v11877
  %v12148 = vpop.f32.mrb[0].mxu0
  %v12149 = vadd.f32 0.0, %v12148
  %v12150 = vpop.f32.mrb[0].mxu0
  %12151 = vmatprep.mubr.f32.mxu0 0.0
  %12152 = vmatmul.mubr.f32.gmra.mrb[0].mxu0 %v11880
  %v12153 = vpop.f32.mrb[0].mxu0
  %v12154 = vadd.f32 0.0, %v12153
  %v12155 = vpop.f32.mrb[0].mxu0
  %12156 = vmatprep.mubr.f32.mxu0 0.0
  %12157 = vmatmul.mubr.f32.gmra.mrb[0].mxu0 %v11883
  %v12158 = vpop.f32.mrb[0].mxu0
  %v12159 = vadd.f32 0.0, %v12158
  %v12160 = vpop.f32.mrb[0].mxu0
  %12161 = vmatprep.mubr.f32.mxu0 0.0
  %12162 = vmatmul.mubr.f32.gmra.mrb[0].mxu0 %v11886
  %v12163 = vpop.f32.mrb[0].mxu0
  %v12164 = vadd.f32 0.0, %v12163
  %v12165 = vpop.f32.mrb[0].mxu0
  %12166 = vmatprep.mubr.f32.mxu0 0.0
  %12167 = vmatmul.mubr.f32.gmra.mrb[0].mxu0 %v11889
  %v12168 = vpop.f32.mrb[0].mxu0
  %v12169 = vadd.f32 0.0, %v12168
  %v12170 = vpop.f32.mrb[0].mxu0
  %12171 = vmatprep.mubr.f32.mxu0 0.0
  %12172 = vmatmul.mubr.f32.gmra.mrb[0].mxu0 %v11892
  %v12173 = vpop.f32.mrb[0].mxu0
  %v12174 = vadd.f32 0.0, %v12173
  %v12175 = vpop.f32.mrb[0].mxu0
  %12176 = vmatprep.mubr.f32.mxu0 0.0
  %12177 = vmatmul.mubr.f32.gmra.mrb[0].mxu0 %v11895
  %v12178 = vpop.f32.mrb[0].mxu0
  %v12179 = vadd.f32 0.0, %v12178
  %v12180 = vpop.f32.mrb[0].mxu0
  %12181 = vmatprep.mubr.f32.mxu0 0.0
  %12182 = vmatmul.mubr.f32.gmra.mrb[0].mxu0 %v11898
  %v12183 = vpop.f32.mrb[0].mxu0
  %v12184 = vadd.f32 0.0, %v12183
  %v12185 = vpop.f32.mrb[0].mxu0
  %12186 = vmatprep.mubr.f32.mxu0 0.0
  %12187 = vmatmul.mubr.f32.gmra.mrb[0].mxu0 %v11901
  %v12188 = vpop.f32.mrb[0].mxu0
  %v12189 = vadd.f32 0.0, %v12188
  %v12190 = vpop.f32.mrb[0].mxu0
  %12191 = vmatprep.mubr.f32.mxu0 0.0
  %12192 = vmatmul.mubr.f32.gmra.mrb[0].mxu0 %v11904
  %v12193 = vpop.f32.mrb[0].mxu0
  %v12194 = vadd.f32 0.0, %v12193
  %v12195 = vpop.f32.mrb[0].mxu0
  %12196 = vmatprep.mubr.f32.mxu0 0.0
  %12197 = vmatmul.mubr.f32.gmra.mrb[0].mxu0 %v11907
  %v12198 = vpop.f32.mrb[0].mxu0
  %v12199 = vadd.f32 0.0, %v12198
  %v12200 = vpop.f32.mrb[0].mxu0
  %12201 = vmatprep.mubr.f32.mxu0 0.0
  %12202 = vmatmul.mubr.f32.gmra.mrb[0].mxu0 %v11910
  %v12203 = vpop.f32.mrb[0].mxu0
  %v12204 = vadd.f32 0.0, %v12203
  %v12205 = vpop.f32.mrb[0].mxu0
  %12206 = vmatprep.mubr.f32.mxu0 0.0
  %12207 = vmatmul.mubr.f32.gmra.mrb[0].mxu0 %v11913
  %v12208 = vpop.f32.mrb[0].mxu0
  %v12209 = vadd.f32 0.0, %v12208
  %v12210 = vpop.f32.mrb[0].mxu0
  %12211 = vmatprep.mubr.f32.mxu0 0.0
  %12212 = vmatmul.mubr.f32.gmra.mrb[0].mxu0 %v11916
  %v12213 = vpop.f32.mrb[0].mxu0
  %v12214 = vadd.f32 0.0, %v12213
  %v12215 = vpop.f32.mrb[0].mxu0
  %12216 = vmatprep.mubr.f32.mxu0 0.0
  %12217 = vmatmul.mubr.f32.gmra.mrb[0].mxu0 %v11919
  %v12218 = vpop.f32.mrb[0].mxu0
  %v12219 = vadd.f32 0.0, %v12218
  %v12220 = vpop.f32.mrb[0].mxu0
  %12221 = vmatprep.mubr.f32.mxu0 0.0
  %12222 = vmatmul.mubr.f32.gmra.mrb[0].mxu0 %v11922
  %v12223 = vpop.f32.mrb[0].mxu0
  %v12224 = vadd.f32 0.0, %v12223
  %v12225 = vpop.f32.mrb[0].mxu0
  %12226 = vmatprep.mubr.f32.mxu0 0.0
  %12227 = vmatmul.mubr.f32.gmra.mrb[0].mxu0 %v11925
  %v12228 = vpop.f32.mrb[0].mxu0
  %v12229 = vadd.f32 0.0, %v12228
  %v12230 = vpop.f32.mrb[0].mxu0
  %12231 = vmatprep.mubr.f32.mxu0 0.0
  %12232 = vmatmul.mubr.f32.gmra.mrb[0].mxu0 %v11928
  %v12233 = vpop.f32.mrb[0].mxu0
  %v12234 = vadd.f32 0.0, %v12233
  %v12235 = vpop.f32.mrb[0].mxu0
  %12236 = vmatprep.mubr.f32.mxu0 0.0
  %12237 = vmatmul.mubr.f32.gmra.mrb[0].mxu0 %v11931
  %v12238 = vpop.f32.mrb[0].mxu0
  %v12239 = vadd.f32 0.0, %v12238
  %v12240 = vpop.f32.mrb[0].mxu0
  %12241 = vmatprep.mubr.f32.mxu0 0.0
  %12242 = vmatmul.mubr.f32.gmra.mrb[0].mxu0 %v11934
  %v12243 = vpop.f32.mrb[0].mxu0
  %v12244 = vadd.f32 0.0, %v12243
  %v12245 = vpop.f32.mrb[0].mxu0
  %12246 = vmatprep.mubr.f32.mxu0 0.0
  %12247 = vmatmul.mubr.f32.gmra.mrb[0].mxu0 %v11937
  %v12248 = vpop.f32.mrb[0].mxu0
  %v12249 = vadd.f32 0.0, %v12248
  %v12250 = vpop.f32.mrb[0].mxu0
  %12251 = vmatprep.mubr.f32.mxu0 0.0
  %12252 = vmatmul.mubr.f32.gmra.mrb[0].mxu0 %v11940
  %v12253 = vpop.f32.mrb[0].mxu0
  %v12254 = vadd.f32 0.0, %v12253
  %v12255 = vpop.f32.mrb[0].mxu0
  %12256 = vmatprep.mubr.f32.mxu0 0.0
  %12257 = vmatmul.mubr.f32.gmra.mrb[0].mxu0 %v11943
  %v12258 = vpop.f32.mrb[0].mxu0
  %v12259 = vadd.f32 0.0, %v12258
  %v12260 = vpop.f32.mrb[0].mxu0
  %12261 = vmatprep.mubr.f32.mxu0 0.0
  %12262 = vmatmul.mubr.f32.gmra.mrb[0].mxu0 %v11946
  %v12263 = vpop.f32.mrb[0].mxu0
  %v12264 = vadd.f32 0.0, %v12263
  %v12265 = vpop.f32.mrb[0].mxu0
  %12266 = vmatprep.mubr.f32.mxu0 0.0
  %12267 = vmatmul.mubr.f32.gmra.mrb[0].mxu0 %v11949
  %v12268 = vpop.f32.mrb[0].mxu0
  %v12269 = vadd.f32 0.0, %v12268
  %v12270 = vpop.f32.mrb[0].mxu0
  %12271 = vmatprep.mubr.f32.mxu0 0.0
  %12272 = vmatmul.mubr.f32.gmra.mrb[0].mxu0 %v11952
  %v12273 = vpop.f32.mrb[0].mxu0
  %v12274 = vadd.f32 0.0, %v12273
  %v12275 = vpop.f32.mrb[0].mxu0
  %12276 = vmatprep.mubr.f32.mxu0 0.0
  %12277 = vmatmul.mubr.f32.gmra.mrb[0].mxu0 %v11955
  %v12278 = vpop.f32.mrb[0].mxu0
  %v12279 = vadd.f32 0.0, %v12278
  %v12280 = vpop.f32.mrb[0].mxu0
  %12281 = vmatprep.mubr.f32.mxu0 0.0
  %12282 = vmatmul.mubr.f32.gmra.mrb[0].mxu0 %v11958
  %v12283 = vpop.f32.mrb[0].mxu0
  %v12284 = vadd.f32 0.0, %v12283
  %v12285 = vpop.f32.mrb[0].mxu0
  %12286 = vmatprep.mubr.f32.mxu0 0.0
  %12287 = vmatmul.mubr.f32.gmra.mrb[0].mxu0 %v11961
  %v12288 = vpop.f32.mrb[0].mxu0
  %v12289 = vadd.f32 0.0, %v12288
  %v12290 = vpop.f32.mrb[0].mxu0
  %12291 = vmatprep.mubr.f32.mxu0 0.0
  %12292 = vmatmul.mubr.f32.gmra.mrb[0].mxu0 %v11964
  %v12293 = vpop.f32.mrb[0].mxu0
  %v12294 = vadd.f32 0.0, %v12293
  %v12295 = vpop.f32.mrb[0].mxu0
  %12296 = vmatprep.mubr.f32.mxu0 0.0
  %12297 = vmatmul.mubr.f32.gmra.mrb[0].mxu0 %v11967
  %v12298 = vpop.f32.mrb[0].mxu0
  %v12299 = vadd.f32 0.0, %v12298
  %v12300 = vpop.f32.mrb[0].mxu0
  %12301 = vmatprep.mubr.f32.mxu0 0.0
  %12302 = vmatmul.mubr.f32.gmra.mrb[0].mxu0 %v11970
  %v12303 = vpop.f32.mrb[0].mxu0
  %v12304 = vadd.f32 0.0, %v12303
  %v12305 = vpop.f32.mrb[0].mxu0
  %12306 = vmatprep.mubr.f32.mxu0 0.0
  %12307 = vmatmul.mubr.f32.gmra.mrb[0].mxu0 %v11973
  %v12308 = vpop.f32.mrb[0].mxu0
  %v12309 = vadd.f32 0.0, %v12308
  %v12310 = vpop.f32.mrb[0].mxu0
  %12311 = vmatprep.mubr.f32.mxu0 0.0
  %12312 = vmatmul.mubr.f32.gmra.mrb[0].mxu0 %v11976
  %v12313 = vpop.f32.mrb[0].mxu0
  %v12314 = vadd.f32 0.0, %v12313
  %v12315 = vpop.f32.mrb[0].mxu0
  %12316 = vmatprep.mubr.f32.mxu0 0.0
  %12317 = vmatmul.mubr.f32.gmra.mrb[0].mxu0 %v11979
  %v12318 = vpop.f32.mrb[0].mxu0
  %v12319 = vadd.f32 0.0, %v12318
  %v12320 = vpop.f32.mrb[0].mxu0
  %12321 = vmatprep.mubr.f32.mxu0 0.0
  %12322 = vmatmul.mubr.f32.gmra.mrb[0].mxu0 %v11982
  %v12323 = vpop.f32.mrb[0].mxu0
  %v12324 = vadd.f32 0.0, %v12323
  %v12325 = vpop.f32.mrb[0].mxu0
  %12326 = vmatprep.mubr.f32.mxu0 0.0
  %12327 = vmatmul.mubr.f32.gmra.mrb[0].mxu0 %v11985
  %v12328 = vpop.f32.mrb[0].mxu0
  %v12329 = vadd.f32 0.0, %v12328
  %v12330 = vpop.f32.mrb[0].mxu0
  %12331 = vmatprep.mubr.f32.mxu0 0.0
  %12332 = vmatmul.mubr.f32.gmra.mrb[0].mxu0 %v11988
  %v12333 = vpop.f32.mrb[0].mxu0
  %v12334 = vadd.f32 0.0, %v12333
  %v12335 = vpop.f32.mrb[0].mxu0
  %12336 = vmatprep.mubr.f32.mxu0 0.0
  %12337 = vmatmul.mubr.f32.gmra.mrb[0].mxu0 %v11991
  %v12338 = vpop.f32.mrb[0].mxu0
  %v12339 = vadd.f32 0.0, %v12338
  %v12340 = vpop.f32.mrb[0].mxu0
  %12341 = vmatprep.mubr.f32.mxu0 0.0
  %12342 = vmatmul.mubr.f32.gmra.mrb[0].mxu0 %v11994
  %v12343 = vpop.f32.mrb[0].mxu0
  %v12344 = vadd.f32 0.0, %v12343
  %v12345 = vpop.f32.mrb[0].mxu0
  %12346 = vmatprep.mubr.f32.mxu0 0.0
  %12347 = vmatmul.mubr.f32.gmra.mrb[0].mxu0 %v11997
  %v12348 = vpop.f32.mrb[0].mxu0
  %v12349 = vadd.f32 0.0, %v12348
  %v12350 = vpop.f32.mrb[0].mxu0
  %12351 = vmatprep.mubr.f32.mxu0 0.0
  %12352 = vmatmul.mubr.f32.gmra.mrb[0].mxu0 %v12000
  %v12353 = vpop.f32.mrb[0].mxu0
  %v12354 = vadd.f32 0.0, %v12353
  %v12355 = vpop.f32.mrb[0].mxu0
  %12356 = vmatprep.mubr.f32.mxu0 0.0
  %12357 = vmatmul.mubr.f32.gmra.mrb[0].mxu0 %v12003
  %v12358 = vpop.f32.mrb[0].mxu0
  %v12359 = vadd.f32 0.0, %v12358
  %v12360 = vpop.f32.mrb[0].mxu0
  %12361 = vmatprep.mubr.f32.mxu0 0.0
  %12362 = vmatmul.mubr.f32.gmra.mrb[0].mxu0 %v12006
  %v12363 = vpop.f32.mrb[0].mxu0
  %v12364 = vadd.f32 0.0, %v12363
  %v12365 = vpop.f32.mrb[0].mxu0
  %12366 = vmatprep.mubr.f32.mxu0 0.0
  %12367 = vmatmul.mubr.f32.gmra.mrb[0].mxu0 %v12009
  %v12368 = vpop.f32.mrb[0].mxu0
  %v12369 = vadd.f32 0.0, %v12368
  %v12370 = vpop.f32.mrb[0].mxu0
  %12371 = vmatprep.mubr.f32.mxu0 0.0
  %12372 = vmatmul.mubr.f32.gmra.mrb[0].mxu0 %v12012
  %v12373 = vpop.f32.mrb[0].mxu0
  %v12374 = vadd.f32 0.0, %v12373
  %v12375 = vpop.f32.mrb[0].mxu0
  %12376 = vmatprep.mubr.f32.mxu0 0.0
  %12377 = vmatmul.mubr.f32.gmra.mrb[0].mxu0 %v12015
  %v12378 = vpop.f32.mrb[0].mxu0
  %v12379 = vadd.f32 0.0, %v12378
  %v12380 = vpop.f32.mrb[0].mxu0
  %12381 = vmatprep.mubr.f32.mxu0 0.0
  %12382 = vmatmul.mubr.f32.gmra.mrb[0].mxu0 %v12018
  %v12383 = vpop.f32.mrb[0].mxu0
  %v12384 = vadd.f32 0.0, %v12383
  %v12385 = vpop.f32.mrb[0].mxu0
  %12386 = vmatprep.mubr.f32.mxu0 0.0
  %12387 = vmatmul.mubr.f32.gmra.mrb[0].mxu0 %v12021
  %v12388 = vpop.f32.mrb[0].mxu0
  %v12389 = vadd.f32 0.0, %v12388
  %v12390 = vpop.f32.mrb[0].mxu0
  %12391 = vmatprep.mubr.f32.mxu0 0.0
  %12392 = vmatmul.mubr.f32.gmra.mrb[0].mxu0 %v12024
  %v12393 = vpop.f32.mrb[0].mxu0
  %v12394 = vadd.f32 0.0, %v12393
  %v12395 = vpop.f32.mrb[0].mxu0
  %12396 = vmatprep.mubr.f32.mxu0 0.0
  %12397 = vmatmul.mubr.f32.gmra.mrb[0].mxu0 %v12027
  %v12398 = vpop.f32.mrb[0].mxu0
  %v12399 = vadd.f32 0.0, %v12398
  %v12400 = vpop.f32.mrb[0].mxu0
  %12401 = vmatprep.mubr.f32.mxu0 0.0
  %12402 = vmatmul.mubr.f32.gmra.mrb[0].mxu0 %v12030
  %v12403 = vpop.f32.mrb[0].mxu0
  %v12404 = vadd.f32 0.0, %v12403
  %v12405 = vpop.f32.mrb[0].mxu0
  %12406 = vmatprep.mubr.f32.mxu0 0.0
  %12407 = vmatmul.mubr.f32.gmra.mrb[0].mxu0 %v12033
  %v12408 = vpop.f32.mrb[0].mxu0
  %v12409 = vadd.f32 0.0, %v12408
  %v12410 = vpop.f32.mrb[0].mxu0
  %12411 = vmatprep.mubr.f32.mxu0 0.0
  %12412 = vmatmul.mubr.f32.gmra.mrb[0].mxu0 %v12036
  %v12413 = vpop.f32.mrb[0].mxu0
  %v12414 = vadd.f32 0.0, %v12413
  %v12415 = vpop.f32.mrb[0].mxu0
  %12416 = vmatprep.mubr.f32.mxu0 0.0
  %12417 = vmatmul.mubr.f32.gmra.mrb[0].mxu0 %v12039
  %v12418 = vpop.f32.mrb[0].mxu0
  %v12419 = vadd.f32 0.0, %v12418
  %v12420 = vpop.f32.mrb[0].mxu0
  %12421 = vmatprep.mubr.f32.mxu0 0.0
  %12422 = vmatmul.mubr.f32.gmra.mrb[0].mxu0 %v12042
  %v12423 = vpop.f32.mrb[0].mxu0
  %v12424 = vadd.f32 0.0, %v12423
  %v12425 = vpop.f32.mrb[0].mxu0
  %12426 = vmatprep.mubr.f32.mxu0 0.0
  %12427 = vmatmul.mubr.f32.gmra.mrb[0].mxu0 %v12045
  %v12428 = vpop.f32.mrb[0].mxu0
  %v12429 = vadd.f32 0.0, %v12428
  %v12430 = vpop.f32.mrb[0].mxu0
  %12431 = vdwg.mxu0
  %v12432 = vadd.f32 %v11726, %v12114
  %v12433 = vadd.f32 %v11727, %v12119
  %v12434 = vadd.f32 %v11728, %v12124
  %v12435 = vadd.f32 %v11729, %v12129
  %v12436 = vadd.f32 %v11730, %v12134
  %v12437 = vadd.f32 %v11731, %v12139
  %v12438 = vadd.f32 %v11732, %v12144
  %v12439 = vadd.f32 %v11733, %v12149
  %v12440 = vadd.f32 %v11734, %v12154
  %v12441 = vadd.f32 %v11735, %v12159
  %v12442 = vadd.f32 %v11736, %v12164
  %v12443 = vadd.f32 %v11737, %v12169
  %v12444 = vadd.f32 %v11738, %v12174
  %v12445 = vadd.f32 %v11739, %v12179
  %v12446 = vadd.f32 %v11740, %v12184
  %v12447 = vadd.f32 %v11741, %v12189
  %v12448 = vadd.f32 %v11742, %v12194
  %v12449 = vadd.f32 %v11743, %v12199
  %v12450 = vadd.f32 %v11744, %v12204
  %v12451 = vadd.f32 %v11745, %v12209
  %v12452 = vadd.f32 %v11746, %v12214
  %v12453 = vadd.f32 %v11747, %v12219
  %v12454 = vadd.f32 %v11748, %v12224
  %v12455 = vadd.f32 %v11749, %v12229
  %v12456 = vadd.f32 %v11750, %v12234
  %v12457 = vadd.f32 %v11751, %v12239
  %v12458 = vadd.f32 %v11752, %v12244
  %v12459 = vadd.f32 %v11753, %v12249
  %v12460 = vadd.f32 %v11754, %v12254
  %v12461 = vadd.f32 %v11755, %v12259
  %v12462 = vadd.f32 %v11756, %v12264
  %v12463 = vadd.f32 %v11757, %v12269
  %v12464 = vadd.f32 %v11758, %v12274
  %v12465 = vadd.f32 %v11759, %v12279
  %v12466 = vadd.f32 %v11760, %v12284
  %v12467 = vadd.f32 %v11761, %v12289
  %v12468 = vadd.f32 %v11762, %v12294
  %v12469 = vadd.f32 %v11763, %v12299
  %v12470 = vadd.f32 %v11764, %v12304
  %v12471 = vadd.f32 %v11765, %v12309
  %v12472 = vadd.f32 %v11766, %v12314
  %v12473 = vadd.f32 %v11767, %v12319
  %v12474 = vadd.f32 %v11768, %v12324
  %v12475 = vadd.f32 %v11769, %v12329
  %v12476 = vadd.f32 %v11770, %v12334
  %v12477 = vadd.f32 %v11771, %v12339
  %v12478 = vadd.f32 %v11772, %v12344
  %v12479 = vadd.f32 %v11773, %v12349
  %v12480 = vadd.f32 %v11774, %v12354
  %v12481 = vadd.f32 %v11775, %v12359
  %v12482 = vadd.f32 %v11776, %v12364
  %v12483 = vadd.f32 %v11777, %v12369
  %v12484 = vadd.f32 %v11778, %v12374
  %v12485 = vadd.f32 %v11779, %v12379
  %v12486 = vadd.f32 %v11780, %v12384
  %v12487 = vadd.f32 %v11781, %v12389
  %v12488 = vadd.f32 %v11782, %v12394
  %v12489 = vadd.f32 %v11783, %v12399
  %v12490 = vadd.f32 %v11784, %v12404
  %v12491 = vadd.f32 %v11785, %v12409
  %v12492 = vadd.f32 %v11786, %v12414
  %v12493 = vadd.f32 %v11787, %v12419
  %v12494 = vadd.f32 %v11788, %v12424
  %v12495 = vadd.f32 %v11789, %v12429
  %v12496 = vld [vmem:[%s4377 + $0x2] sm:$0xff]
  %v12497 = vld [vmem:[%s4377 + $0xa] sm:$0xff]
  %v12498 = vld [vmem:[%s4377 + $0x1a] sm:$0xff]
  %v12499 = vld [vmem:[%s4377 + $0x22] sm:$0xff]
  %v12500 = vld [vmem:[%s4377 + $0x32] sm:$0xff]
  %v12501 = vld [vmem:[%s4377 + $0x3a] sm:$0xff]
  %v12502 = vld [vmem:[%s4377 + $0x4a] sm:$0xff]
  %v12503 = vld [vmem:[%s4377 + $0x52] sm:$0xff]
  %v12504 = vld [vmem:[%s4377 + $0x62] sm:$0xff]
  %v12505 = vld [vmem:[%s4377 + $0x6a] sm:$0xff]
  %v12506 = vld [vmem:[%s4377 + $0x7a] sm:$0xff]
  %v12507 = vld [vmem:[%s4377 + $0x82] sm:$0xff]
  %v12508 = vld [vmem:[%s4377 + $0x92] sm:$0xff]
  %v12509 = vld [vmem:[%s4377 + $0x9a] sm:$0xff]
  %v12510 = vld [vmem:[%s4377 + $0xaa] sm:$0xff]
  %v12511 = vld [vmem:[%s4377 + $0xb2] sm:$0xff]
  %v12512 = vld [vmem:[%s4377 + $0xc2] sm:$0xff]
  %v12513 = vld [vmem:[%s4377 + $0xca] sm:$0xff]
  %v12514 = vld [vmem:[%s4377 + $0xda] sm:$0xff]
  %v12515 = vld [vmem:[%s4377 + $0xe2] sm:$0xff]
  %v12516 = vld [vmem:[%s4377 + $0xf2] sm:$0xff]
  %v12517 = vld [vmem:[%s4377 + $0xfa] sm:$0xff]
  %v12518 = vld [vmem:[%s4377 + $0x10a] sm:$0xff]
  %v12519 = vld [vmem:[%s4377 + $0x112] sm:$0xff]
  %v12520 = vld [vmem:[%s4377 + $0x122] sm:$0xff]
  %v12521 = vld [vmem:[%s4377 + $0x12a] sm:$0xff]
  %v12522 = vld [vmem:[%s4377 + $0x13a] sm:$0xff]
  %v12523 = vld [vmem:[%s4377 + $0x142] sm:$0xff]
  %v12524 = vld [vmem:[%s4377 + $0x152] sm:$0xff]
  %v12525 = vld [vmem:[%s4377 + $0x15a] sm:$0xff]
  %v12526 = vld [vmem:[%s4377 + $0x16a] sm:$0xff]
  %v12527 = vld [vmem:[%s4377 + $0x172] sm:$0xff]
  %v12528 = vld [vmem:[%s4377 + $0x1b2] sm:$0xff]
  %v12529 = vld [vmem:[%s4377 + $0x1ba] sm:$0xff]
  %v12530 = vld [vmem:[%s4377 + $0x1ca] sm:$0xff]
  %v12531 = vld [vmem:[%s4377 + $0x1d2] sm:$0xff]
  %v12532 = vld [vmem:[%s4377 + $0x1e2] sm:$0xff]
  %v12533 = vld [vmem:[%s4377 + $0x1ea] sm:$0xff]
  %v12534 = vld [vmem:[%s4377 + $0x1fa] sm:$0xff]
  %v12535 = vld [vmem:[%s4377 + $0x202] sm:$0xff]
  %v12536 = vld [vmem:[%s4377 + $0x212] sm:$0xff]
  %v12537 = vld [vmem:[%s4377 + $0x21a] sm:$0xff]
  %v12538 = vld [vmem:[%s4377 + $0x22a] sm:$0xff]
  %v12539 = vld [vmem:[%s4377 + $0x232] sm:$0xff]
  %v12540 = vld [vmem:[%s4377 + $0x242] sm:$0xff]
  %v12541 = vld [vmem:[%s4377 + $0x24a] sm:$0xff]
  %v12542 = vld [vmem:[%s4377 + $0x25a] sm:$0xff]
  %v12543 = vld [vmem:[%s4377 + $0x262] sm:$0xff]
  %v12544 = vld [vmem:[%s4377 + $0x272] sm:$0xff]
  %v12545 = vld [vmem:[%s4377 + $0x27a] sm:$0xff]
  %v12546 = vld [vmem:[%s4377 + $0x28a] sm:$0xff]
  %v12547 = vld [vmem:[%s4377 + $0x292] sm:$0xff]
  %v12548 = vld [vmem:[%s4377 + $0x2a2] sm:$0xff]
  %v12549 = vld [vmem:[%s4377 + $0x2aa] sm:$0xff]
  %v12550 = vld [vmem:[%s4377 + $0x2ba] sm:$0xff]
  %v12551 = vld [vmem:[%s4377 + $0x2c2] sm:$0xff]
  %v12552 = vld [vmem:[%s4377 + $0x2d2] sm:$0xff]
  %v12553 = vld [vmem:[%s4377 + $0x2da] sm:$0xff]
  %v12554 = vld [vmem:[%s4377 + $0x2ea] sm:$0xff]
  %v12555 = vld [vmem:[%s4377 + $0x2f2] sm:$0xff]
  %v12556 = vld [vmem:[%s4377 + $0x302] sm:$0xff]
  %v12557 = vld [vmem:[%s4377 + $0x30a] sm:$0xff]
  %v12558 = vld [vmem:[%s4377 + $0x31a] sm:$0xff]
  %v12559 = vld [vmem:[%s4377 + $0x322] sm:$0xff]
  %v12560 = vld [vmem:[%s2 + $0x40] sm:$0xff]
  %v12562 = vsel %vm28, %v12496, 0
  %v12565 = vsel %vm28, %v12497, 0
  %v12568 = vsel %vm28, %v12498, 0
  %v12571 = vsel %vm28, %v12499, 0
  %v12574 = vsel %vm28, %v12500, 0
  %v12577 = vsel %vm28, %v12501, 0
  %v12580 = vsel %vm28, %v12502, 0
  %v12583 = vsel %vm28, %v12503, 0
  %v12586 = vsel %vm28, %v12504, 0
  %v12589 = vsel %vm28, %v12505, 0
  %v12592 = vsel %vm28, %v12506, 0
  %v12595 = vsel %vm28, %v12507, 0
  %v12598 = vsel %vm28, %v12508, 0
  %v12601 = vsel %vm28, %v12509, 0
  %v12604 = vsel %vm28, %v12510, 0
  %v12607 = vsel %vm28, %v12511, 0
  %v12610 = vsel %vm28, %v12512, 0
  %v12613 = vsel %vm28, %v12513, 0
  %v12616 = vsel %vm28, %v12514, 0
  %v12619 = vsel %vm28, %v12515, 0
  %v12622 = vsel %vm28, %v12516, 0
  %v12625 = vsel %vm28, %v12517, 0
  %v12628 = vsel %vm28, %v12518, 0
  %v12631 = vsel %vm28, %v12519, 0
  %v12634 = vsel %vm28, %v12520, 0
  %v12637 = vsel %vm28, %v12521, 0
  %v12640 = vsel %vm28, %v12522, 0
  %v12643 = vsel %vm28, %v12523, 0
  %v12646 = vsel %vm28, %v12524, 0
  %v12649 = vsel %vm28, %v12525, 0
  %v12652 = vsel %vm28, %v12526, 0
  %v12655 = vsel %vm28, %v12527, 0
  %v12658 = vsel %vm28, %v12528, 0
  %v12661 = vsel %vm28, %v12529, 0
  %v12664 = vsel %vm28, %v12530, 0
  %v12667 = vsel %vm28, %v12531, 0
  %v12670 = vsel %vm28, %v12532, 0
  %v12673 = vsel %vm28, %v12533, 0
  %v12676 = vsel %vm28, %v12534, 0
  %v12679 = vsel %vm28, %v12535, 0
  %v12682 = vsel %vm28, %v12536, 0
  %v12685 = vsel %vm28, %v12537, 0
  %v12688 = vsel %vm28, %v12538, 0
  %v12691 = vsel %vm28, %v12539, 0
  %v12694 = vsel %vm28, %v12540, 0
  %v12697 = vsel %vm28, %v12541, 0
  %v12700 = vsel %vm28, %v12542, 0
  %v12703 = vsel %vm28, %v12543, 0
  %v12706 = vsel %vm28, %v12544, 0
  %v12709 = vsel %vm28, %v12545, 0
  %v12712 = vsel %vm28, %v12546, 0
  %v12715 = vsel %vm28, %v12547, 0
  %v12718 = vsel %vm28, %v12548, 0
  %v12721 = vsel %vm28, %v12549, 0
  %v12724 = vsel %vm28, %v12550, 0
  %v12727 = vsel %vm28, %v12551, 0
  %v12730 = vsel %vm28, %v12552, 0
  %v12733 = vsel %vm28, %v12553, 0
  %v12736 = vsel %vm28, %v12554, 0
  %v12739 = vsel %vm28, %v12555, 0
  %v12742 = vsel %vm28, %v12556, 0
  %v12745 = vsel %vm28, %v12557, 0
  %v12748 = vsel %vm28, %v12558, 0
  %v12751 = vsel %vm28, %v12559, 0
  %12753 = vmatprep.subr.mxu0 0.0
  %12754 = vmatpush1.msra.mxu0 %v12560
  %12755 = vmatprep.subr.mxu0 0.0
  %12756 = vmatpush1.msra.mxu0 0.0
  %12757 = vmatprep.subr.mxu0 0.0
  %12758 = vmatpush1.msra.mxu0 0.0
  %12759 = vmatprep.subr.mxu0 0.0
  %12760 = vmatpush1.msra.mxu0 0.0
  %12761 = vmatprep.subr.mxu0 0.0
  %12762 = vmatpush1.msra.mxu0 0.0
  %12763 = vmatprep.subr.mxu0 0.0
  %12764 = vmatpush1.msra.mxu0 0.0
  %12765 = vmatprep.subr.mxu0 0.0
  %12766 = vmatpush1.msra.mxu0 0.0
  %12767 = vmatprep.subr.mxu0 0.0
  %12768 = vmatpush1.msra.mxu0 0.0
  %12769 = vmatprep.subr.mxu0 0.0
  %12770 = vmatpush1.msra.mxu0 0.0
  %12771 = vmatprep.subr.mxu0 0.0
  %12772 = vmatpush1.msra.mxu0 0.0
  %12773 = vmatprep.subr.mxu0 0.0
  %12774 = vmatpush1.msra.mxu0 0.0
  %12775 = vmatprep.subr.mxu0 0.0
  %12776 = vmatpush1.msra.mxu0 0.0
  %12777 = vmatprep.subr.mxu0 0.0
  %12778 = vmatpush1.msra.mxu0 0.0
  %12779 = vmatprep.subr.mxu0 0.0
  %12780 = vmatpush1.msra.mxu0 0.0
  %12781 = vmatprep.subr.mxu0 0.0
  %12782 = vmatpush1.msra.mxu0 0.0
  %12783 = vmatprep.subr.mxu0 0.0
  %12784 = vmatpush1.msra.mxu0 0.0
  %12785 = vmatprep.subr.mxu0 0.0
  %12786 = vmatpush1.msra.mxu0 0.0
  %12787 = vmatprep.subr.mxu0 0.0
  %12788 = vmatpush1.msra.mxu0 0.0
  %12789 = vmatprep.subr.mxu0 0.0
  %12790 = vmatpush1.msra.mxu0 0.0
  %12791 = vmatprep.subr.mxu0 0.0
  %12792 = vmatpush1.msra.mxu0 0.0
  %12793 = vmatprep.subr.mxu0 0.0
  %12794 = vmatpush1.msra.mxu0 0.0
  %12795 = vmatprep.subr.mxu0 0.0
  %12796 = vmatpush1.msra.mxu0 0.0
  %12797 = vmatprep.subr.mxu0 0.0
  %12798 = vmatpush1.msra.mxu0 0.0
  %12799 = vmatprep.subr.mxu0 0.0
  %12800 = vmatpush1.msra.mxu0 0.0
  %12801 = vmatprep.subr.mxu0 0.0
  %12802 = vmatpush1.msra.mxu0 0.0
  %12803 = vmatprep.subr.mxu0 0.0
  %12804 = vmatpush1.msra.mxu0 0.0
  %12805 = vmatprep.subr.mxu0 0.0
  %12806 = vmatpush1.msra.mxu0 0.0
  %12807 = vmatprep.subr.mxu0 0.0
  %12808 = vmatpush1.msra.mxu0 0.0
  %12809 = vmatprep.subr.mxu0 0.0
  %12810 = vmatpush1.msra.mxu0 0.0
  %12811 = vmatprep.subr.mxu0 0.0
  %12812 = vmatpush1.msra.mxu0 0.0
  %12813 = vmatprep.subr.mxu0 0.0
  %12814 = vmatpush1.msra.mxu0 0.0
  %12815 = vmatprep.subr.mxu0 0.0
  %12816 = vmatpush1.msra.mxu0 0.0
  %12817 = vmatprep.mubr.f32.mxu0 0.0
  %12818 = vmatmul.mubr.f32.gmra.mrb[0].mxu0 %v12562
  %v12819 = vpop.f32.mrb[0].mxu0
  %v12820 = vadd.f32 0.0, %v12819
  %v12821 = vpop.f32.mrb[0].mxu0
  %12822 = vmatprep.mubr.f32.mxu0 0.0
  %12823 = vmatmul.mubr.f32.gmra.mrb[0].mxu0 %v12565
  %v12824 = vpop.f32.mrb[0].mxu0
  %v12825 = vadd.f32 0.0, %v12824
  %v12826 = vpop.f32.mrb[0].mxu0
  %12827 = vmatprep.mubr.f32.mxu0 0.0
  %12828 = vmatmul.mubr.f32.gmra.mrb[0].mxu0 %v12568
  %v12829 = vpop.f32.mrb[0].mxu0
  %v12830 = vadd.f32 0.0, %v12829
  %v12831 = vpop.f32.mrb[0].mxu0
  %12832 = vmatprep.mubr.f32.mxu0 0.0
  %12833 = vmatmul.mubr.f32.gmra.mrb[0].mxu0 %v12571
  %v12834 = vpop.f32.mrb[0].mxu0
  %v12835 = vadd.f32 0.0, %v12834
  %v12836 = vpop.f32.mrb[0].mxu0
  %12837 = vmatprep.mubr.f32.mxu0 0.0
  %12838 = vmatmul.mubr.f32.gmra.mrb[0].mxu0 %v12574
  %v12839 = vpop.f32.mrb[0].mxu0
  %v12840 = vadd.f32 0.0, %v12839
  %v12841 = vpop.f32.mrb[0].mxu0
  %12842 = vmatprep.mubr.f32.mxu0 0.0
  %12843 = vmatmul.mubr.f32.gmra.mrb[0].mxu0 %v12577
  %v12844 = vpop.f32.mrb[0].mxu0
  %v12845 = vadd.f32 0.0, %v12844
  %v12846 = vpop.f32.mrb[0].mxu0
  %12847 = vmatprep.mubr.f32.mxu0 0.0
  %12848 = vmatmul.mubr.f32.gmra.mrb[0].mxu0 %v12580
  %v12849 = vpop.f32.mrb[0].mxu0
  %v12850 = vadd.f32 0.0, %v12849
  %v12851 = vpop.f32.mrb[0].mxu0
  %12852 = vmatprep.mubr.f32.mxu0 0.0
  %12853 = vmatmul.mubr.f32.gmra.mrb[0].mxu0 %v12583
  %v12854 = vpop.f32.mrb[0].mxu0
  %v12855 = vadd.f32 0.0, %v12854
  %v12856 = vpop.f32.mrb[0].mxu0
  %12857 = vmatprep.mubr.f32.mxu0 0.0
  %12858 = vmatmul.mubr.f32.gmra.mrb[0].mxu0 %v12586
  %v12859 = vpop.f32.mrb[0].mxu0
  %v12860 = vadd.f32 0.0, %v12859
  %v12861 = vpop.f32.mrb[0].mxu0
  %12862 = vmatprep.mubr.f32.mxu0 0.0
  %12863 = vmatmul.mubr.f32.gmra.mrb[0].mxu0 %v12589
  %v12864 = vpop.f32.mrb[0].mxu0
  %v12865 = vadd.f32 0.0, %v12864
  %v12866 = vpop.f32.mrb[0].mxu0
  %12867 = vmatprep.mubr.f32.mxu0 0.0
  %12868 = vmatmul.mubr.f32.gmra.mrb[0].mxu0 %v12592
  %v12869 = vpop.f32.mrb[0].mxu0
  %v12870 = vadd.f32 0.0, %v12869
  %v12871 = vpop.f32.mrb[0].mxu0
  %12872 = vmatprep.mubr.f32.mxu0 0.0
  %12873 = vmatmul.mubr.f32.gmra.mrb[0].mxu0 %v12595
  %v12874 = vpop.f32.mrb[0].mxu0
  %v12875 = vadd.f32 0.0, %v12874
  %v12876 = vpop.f32.mrb[0].mxu0
  %12877 = vmatprep.mubr.f32.mxu0 0.0
  %12878 = vmatmul.mubr.f32.gmra.mrb[0].mxu0 %v12598
  %v12879 = vpop.f32.mrb[0].mxu0
  %v12880 = vadd.f32 0.0, %v12879
  %v12881 = vpop.f32.mrb[0].mxu0
  %12882 = vmatprep.mubr.f32.mxu0 0.0
  %12883 = vmatmul.mubr.f32.gmra.mrb[0].mxu0 %v12601
  %v12884 = vpop.f32.mrb[0].mxu0
  %v12885 = vadd.f32 0.0, %v12884
  %v12886 = vpop.f32.mrb[0].mxu0
  %12887 = vmatprep.mubr.f32.mxu0 0.0
  %12888 = vmatmul.mubr.f32.gmra.mrb[0].mxu0 %v12604
  %v12889 = vpop.f32.mrb[0].mxu0
  %v12890 = vadd.f32 0.0, %v12889
  %v12891 = vpop.f32.mrb[0].mxu0
  %12892 = vmatprep.mubr.f32.mxu0 0.0
  %12893 = vmatmul.mubr.f32.gmra.mrb[0].mxu0 %v12607
  %v12894 = vpop.f32.mrb[0].mxu0
  %v12895 = vadd.f32 0.0, %v12894
  %v12896 = vpop.f32.mrb[0].mxu0
  %12897 = vmatprep.mubr.f32.mxu0 0.0
  %12898 = vmatmul.mubr.f32.gmra.mrb[0].mxu0 %v12610
  %v12899 = vpop.f32.mrb[0].mxu0
  %v12900 = vadd.f32 0.0, %v12899
  %v12901 = vpop.f32.mrb[0].mxu0
  %12902 = vmatprep.mubr.f32.mxu0 0.0
  %12903 = vmatmul.mubr.f32.gmra.mrb[0].mxu0 %v12613
  %v12904 = vpop.f32.mrb[0].mxu0
  %v12905 = vadd.f32 0.0, %v12904
  %v12906 = vpop.f32.mrb[0].mxu0
  %12907 = vmatprep.mubr.f32.mxu0 0.0
  %12908 = vmatmul.mubr.f32.gmra.mrb[0].mxu0 %v12616
  %v12909 = vpop.f32.mrb[0].mxu0
  %v12910 = vadd.f32 0.0, %v12909
  %v12911 = vpop.f32.mrb[0].mxu0
  %12912 = vmatprep.mubr.f32.mxu0 0.0
  %12913 = vmatmul.mubr.f32.gmra.mrb[0].mxu0 %v12619
  %v12914 = vpop.f32.mrb[0].mxu0
  %v12915 = vadd.f32 0.0, %v12914
  %v12916 = vpop.f32.mrb[0].mxu0
  %12917 = vmatprep.mubr.f32.mxu0 0.0
  %12918 = vmatmul.mubr.f32.gmra.mrb[0].mxu0 %v12622
  %v12919 = vpop.f32.mrb[0].mxu0
  %v12920 = vadd.f32 0.0, %v12919
  %v12921 = vpop.f32.mrb[0].mxu0
  %12922 = vmatprep.mubr.f32.mxu0 0.0
  %12923 = vmatmul.mubr.f32.gmra.mrb[0].mxu0 %v12625
  %v12924 = vpop.f32.mrb[0].mxu0
  %v12925 = vadd.f32 0.0, %v12924
  %v12926 = vpop.f32.mrb[0].mxu0
  %12927 = vmatprep.mubr.f32.mxu0 0.0
  %12928 = vmatmul.mubr.f32.gmra.mrb[0].mxu0 %v12628
  %v12929 = vpop.f32.mrb[0].mxu0
  %v12930 = vadd.f32 0.0, %v12929
  %v12931 = vpop.f32.mrb[0].mxu0
  %12932 = vmatprep.mubr.f32.mxu0 0.0
  %12933 = vmatmul.mubr.f32.gmra.mrb[0].mxu0 %v12631
  %v12934 = vpop.f32.mrb[0].mxu0
  %v12935 = vadd.f32 0.0, %v12934
  %v12936 = vpop.f32.mrb[0].mxu0
  %12937 = vmatprep.mubr.f32.mxu0 0.0
  %12938 = vmatmul.mubr.f32.gmra.mrb[0].mxu0 %v12634
  %v12939 = vpop.f32.mrb[0].mxu0
  %v12940 = vadd.f32 0.0, %v12939
  %v12941 = vpop.f32.mrb[0].mxu0
  %12942 = vmatprep.mubr.f32.mxu0 0.0
  %12943 = vmatmul.mubr.f32.gmra.mrb[0].mxu0 %v12637
  %v12944 = vpop.f32.mrb[0].mxu0
  %v12945 = vadd.f32 0.0, %v12944
  %v12946 = vpop.f32.mrb[0].mxu0
  %12947 = vmatprep.mubr.f32.mxu0 0.0
  %12948 = vmatmul.mubr.f32.gmra.mrb[0].mxu0 %v12640
  %v12949 = vpop.f32.mrb[0].mxu0
  %v12950 = vadd.f32 0.0, %v12949
  %v12951 = vpop.f32.mrb[0].mxu0
  %12952 = vmatprep.mubr.f32.mxu0 0.0
  %12953 = vmatmul.mubr.f32.gmra.mrb[0].mxu0 %v12643
  %v12954 = vpop.f32.mrb[0].mxu0
  %v12955 = vadd.f32 0.0, %v12954
  %v12956 = vpop.f32.mrb[0].mxu0
  %12957 = vmatprep.mubr.f32.mxu0 0.0
  %12958 = vmatmul.mubr.f32.gmra.mrb[0].mxu0 %v12646
  %v12959 = vpop.f32.mrb[0].mxu0
  %v12960 = vadd.f32 0.0, %v12959
  %v12961 = vpop.f32.mrb[0].mxu0
  %12962 = vmatprep.mubr.f32.mxu0 0.0
  %12963 = vmatmul.mubr.f32.gmra.mrb[0].mxu0 %v12649
  %v12964 = vpop.f32.mrb[0].mxu0
  %v12965 = vadd.f32 0.0, %v12964
  %v12966 = vpop.f32.mrb[0].mxu0
  %12967 = vmatprep.mubr.f32.mxu0 0.0
  %12968 = vmatmul.mubr.f32.gmra.mrb[0].mxu0 %v12652
  %v12969 = vpop.f32.mrb[0].mxu0
  %v12970 = vadd.f32 0.0, %v12969
  %v12971 = vpop.f32.mrb[0].mxu0
  %12972 = vmatprep.mubr.f32.mxu0 0.0
  %12973 = vmatmul.mubr.f32.gmra.mrb[0].mxu0 %v12655
  %v12974 = vpop.f32.mrb[0].mxu0
  %v12975 = vadd.f32 0.0, %v12974
  %v12976 = vpop.f32.mrb[0].mxu0
  %12977 = vmatprep.mubr.f32.mxu0 0.0
  %12978 = vmatmul.mubr.f32.gmra.mrb[0].mxu0 %v12658
  %v12979 = vpop.f32.mrb[0].mxu0
  %v12980 = vadd.f32 0.0, %v12979
  %v12981 = vpop.f32.mrb[0].mxu0
  %12982 = vmatprep.mubr.f32.mxu0 0.0
  %12983 = vmatmul.mubr.f32.gmra.mrb[0].mxu0 %v12661
  %v12984 = vpop.f32.mrb[0].mxu0
  %v12985 = vadd.f32 0.0, %v12984
  %v12986 = vpop.f32.mrb[0].mxu0
  %12987 = vmatprep.mubr.f32.mxu0 0.0
  %12988 = vmatmul.mubr.f32.gmra.mrb[0].mxu0 %v12664
  %v12989 = vpop.f32.mrb[0].mxu0
  %v12990 = vadd.f32 0.0, %v12989
  %v12991 = vpop.f32.mrb[0].mxu0
  %12992 = vmatprep.mubr.f32.mxu0 0.0
  %12993 = vmatmul.mubr.f32.gmra.mrb[0].mxu0 %v12667
  %v12994 = vpop.f32.mrb[0].mxu0
  %v12995 = vadd.f32 0.0, %v12994
  %v12996 = vpop.f32.mrb[0].mxu0
  %12997 = vmatprep.mubr.f32.mxu0 0.0
  %12998 = vmatmul.mubr.f32.gmra.mrb[0].mxu0 %v12670
  %v12999 = vpop.f32.mrb[0].mxu0
  %v13000 = vadd.f32 0.0, %v12999
  %v13001 = vpop.f32.mrb[0].mxu0
  %13002 = vmatprep.mubr.f32.mxu0 0.0
  %13003 = vmatmul.mubr.f32.gmra.mrb[0].mxu0 %v12673
  %v13004 = vpop.f32.mrb[0].mxu0
  %v13005 = vadd.f32 0.0, %v13004
  %v13006 = vpop.f32.mrb[0].mxu0
  %13007 = vmatprep.mubr.f32.mxu0 0.0
  %13008 = vmatmul.mubr.f32.gmra.mrb[0].mxu0 %v12676
  %v13009 = vpop.f32.mrb[0].mxu0
  %v13010 = vadd.f32 0.0, %v13009
  %v13011 = vpop.f32.mrb[0].mxu0
  %13012 = vmatprep.mubr.f32.mxu0 0.0
  %13013 = vmatmul.mubr.f32.gmra.mrb[0].mxu0 %v12679
  %v13014 = vpop.f32.mrb[0].mxu0
  %v13015 = vadd.f32 0.0, %v13014
  %v13016 = vpop.f32.mrb[0].mxu0
  %13017 = vmatprep.mubr.f32.mxu0 0.0
  %13018 = vmatmul.mubr.f32.gmra.mrb[0].mxu0 %v12682
  %v13019 = vpop.f32.mrb[0].mxu0
  %v13020 = vadd.f32 0.0, %v13019
  %v13021 = vpop.f32.mrb[0].mxu0
  %13022 = vmatprep.mubr.f32.mxu0 0.0
  %13023 = vmatmul.mubr.f32.gmra.mrb[0].mxu0 %v12685
  %v13024 = vpop.f32.mrb[0].mxu0
  %v13025 = vadd.f32 0.0, %v13024
  %v13026 = vpop.f32.mrb[0].mxu0
  %13027 = vmatprep.mubr.f32.mxu0 0.0
  %13028 = vmatmul.mubr.f32.gmra.mrb[0].mxu0 %v12688
  %v13029 = vpop.f32.mrb[0].mxu0
  %v13030 = vadd.f32 0.0, %v13029
  %v13031 = vpop.f32.mrb[0].mxu0
  %13032 = vmatprep.mubr.f32.mxu0 0.0
  %13033 = vmatmul.mubr.f32.gmra.mrb[0].mxu0 %v12691
  %v13034 = vpop.f32.mrb[0].mxu0
  %v13035 = vadd.f32 0.0, %v13034
  %v13036 = vpop.f32.mrb[0].mxu0
  %13037 = vmatprep.mubr.f32.mxu0 0.0
  %13038 = vmatmul.mubr.f32.gmra.mrb[0].mxu0 %v12694
  %v13039 = vpop.f32.mrb[0].mxu0
  %v13040 = vadd.f32 0.0, %v13039
  %v13041 = vpop.f32.mrb[0].mxu0
  %13042 = vmatprep.mubr.f32.mxu0 0.0
  %13043 = vmatmul.mubr.f32.gmra.mrb[0].mxu0 %v12697
  %v13044 = vpop.f32.mrb[0].mxu0
  %v13045 = vadd.f32 0.0, %v13044
  %v13046 = vpop.f32.mrb[0].mxu0
  %13047 = vmatprep.mubr.f32.mxu0 0.0
  %13048 = vmatmul.mubr.f32.gmra.mrb[0].mxu0 %v12700
  %v13049 = vpop.f32.mrb[0].mxu0
  %v13050 = vadd.f32 0.0, %v13049
  %v13051 = vpop.f32.mrb[0].mxu0
  %13052 = vmatprep.mubr.f32.mxu0 0.0
  %13053 = vmatmul.mubr.f32.gmra.mrb[0].mxu0 %v12703
  %v13054 = vpop.f32.mrb[0].mxu0
  %v13055 = vadd.f32 0.0, %v13054
  %v13056 = vpop.f32.mrb[0].mxu0
  %13057 = vmatprep.mubr.f32.mxu0 0.0
  %13058 = vmatmul.mubr.f32.gmra.mrb[0].mxu0 %v12706
  %v13059 = vpop.f32.mrb[0].mxu0
  %v13060 = vadd.f32 0.0, %v13059
  %v13061 = vpop.f32.mrb[0].mxu0
  %13062 = vmatprep.mubr.f32.mxu0 0.0
  %13063 = vmatmul.mubr.f32.gmra.mrb[0].mxu0 %v12709
  %v13064 = vpop.f32.mrb[0].mxu0
  %v13065 = vadd.f32 0.0, %v13064
  %v13066 = vpop.f32.mrb[0].mxu0
  %13067 = vmatprep.mubr.f32.mxu0 0.0
  %13068 = vmatmul.mubr.f32.gmra.mrb[0].mxu0 %v12712
  %v13069 = vpop.f32.mrb[0].mxu0
  %v13070 = vadd.f32 0.0, %v13069
  %v13071 = vpop.f32.mrb[0].mxu0
  %13072 = vmatprep.mubr.f32.mxu0 0.0
  %13073 = vmatmul.mubr.f32.gmra.mrb[0].mxu0 %v12715
  %v13074 = vpop.f32.mrb[0].mxu0
  %v13075 = vadd.f32 0.0, %v13074
  %v13076 = vpop.f32.mrb[0].mxu0
  %13077 = vmatprep.mubr.f32.mxu0 0.0
  %13078 = vmatmul.mubr.f32.gmra.mrb[0].mxu0 %v12718
  %v13079 = vpop.f32.mrb[0].mxu0
  %v13080 = vadd.f32 0.0, %v13079
  %v13081 = vpop.f32.mrb[0].mxu0
  %13082 = vmatprep.mubr.f32.mxu0 0.0
  %13083 = vmatmul.mubr.f32.gmra.mrb[0].mxu0 %v12721
  %v13084 = vpop.f32.mrb[0].mxu0
  %v13085 = vadd.f32 0.0, %v13084
  %v13086 = vpop.f32.mrb[0].mxu0
  %13087 = vmatprep.mubr.f32.mxu0 0.0
  %13088 = vmatmul.mubr.f32.gmra.mrb[0].mxu0 %v12724
  %v13089 = vpop.f32.mrb[0].mxu0
  %v13090 = vadd.f32 0.0, %v13089
  %v13091 = vpop.f32.mrb[0].mxu0
  %13092 = vmatprep.mubr.f32.mxu0 0.0
  %13093 = vmatmul.mubr.f32.gmra.mrb[0].mxu0 %v12727
  %v13094 = vpop.f32.mrb[0].mxu0
  %v13095 = vadd.f32 0.0, %v13094
  %v13096 = vpop.f32.mrb[0].mxu0
  %13097 = vmatprep.mubr.f32.mxu0 0.0
  %13098 = vmatmul.mubr.f32.gmra.mrb[0].mxu0 %v12730
  %v13099 = vpop.f32.mrb[0].mxu0
  %v13100 = vadd.f32 0.0, %v13099
  %v13101 = vpop.f32.mrb[0].mxu0
  %13102 = vmatprep.mubr.f32.mxu0 0.0
  %13103 = vmatmul.mubr.f32.gmra.mrb[0].mxu0 %v12733
  %v13104 = vpop.f32.mrb[0].mxu0
  %v13105 = vadd.f32 0.0, %v13104
  %v13106 = vpop.f32.mrb[0].mxu0
  %13107 = vmatprep.mubr.f32.mxu0 0.0
  %13108 = vmatmul.mubr.f32.gmra.mrb[0].mxu0 %v12736
  %v13109 = vpop.f32.mrb[0].mxu0
  %v13110 = vadd.f32 0.0, %v13109
  %v13111 = vpop.f32.mrb[0].mxu0
  %13112 = vmatprep.mubr.f32.mxu0 0.0
  %13113 = vmatmul.mubr.f32.gmra.mrb[0].mxu0 %v12739
  %v13114 = vpop.f32.mrb[0].mxu0
  %v13115 = vadd.f32 0.0, %v13114
  %v13116 = vpop.f32.mrb[0].mxu0
  %13117 = vmatprep.mubr.f32.mxu0 0.0
  %13118 = vmatmul.mubr.f32.gmra.mrb[0].mxu0 %v12742
  %v13119 = vpop.f32.mrb[0].mxu0
  %v13120 = vadd.f32 0.0, %v13119
  %v13121 = vpop.f32.mrb[0].mxu0
  %13122 = vmatprep.mubr.f32.mxu0 0.0
  %13123 = vmatmul.mubr.f32.gmra.mrb[0].mxu0 %v12745
  %v13124 = vpop.f32.mrb[0].mxu0
  %v13125 = vadd.f32 0.0, %v13124
  %v13126 = vpop.f32.mrb[0].mxu0
  %13127 = vmatprep.mubr.f32.mxu0 0.0
  %13128 = vmatmul.mubr.f32.gmra.mrb[0].mxu0 %v12748
  %v13129 = vpop.f32.mrb[0].mxu0
  %v13130 = vadd.f32 0.0, %v13129
  %v13131 = vpop.f32.mrb[0].mxu0
  %13132 = vmatprep.mubr.f32.mxu0 0.0
  %13133 = vmatmul.mubr.f32.gmra.mrb[0].mxu0 %v12751
  %v13134 = vpop.f32.mrb[0].mxu0
  %v13135 = vadd.f32 0.0, %v13134
  %v13136 = vpop.f32.mrb[0].mxu0
  %13137 = vdwg.mxu0
  %v13138 = vadd.f32 %v12432, %v12820
  %v13139 = vadd.f32 %v12433, %v12825
  %v13140 = vadd.f32 %v12434, %v12830
  %v13141 = vadd.f32 %v12435, %v12835
  %v13142 = vadd.f32 %v12436, %v12840
  %v13143 = vadd.f32 %v12437, %v12845
  %v13144 = vadd.f32 %v12438, %v12850
  %v13145 = vadd.f32 %v12439, %v12855
  %v13146 = vadd.f32 %v12440, %v12860
  %v13147 = vadd.f32 %v12441, %v12865
  %v13148 = vadd.f32 %v12442, %v12870
  %v13149 = vadd.f32 %v12443, %v12875
  %v13150 = vadd.f32 %v12444, %v12880
  %v13151 = vadd.f32 %v12445, %v12885
  %v13152 = vadd.f32 %v12446, %v12890
  %v13153 = vadd.f32 %v12447, %v12895
  %v13154 = vadd.f32 %v12448, %v12900
  %v13155 = vadd.f32 %v12449, %v12905
  %v13156 = vadd.f32 %v12450, %v12910
  %v13157 = vadd.f32 %v12451, %v12915
  %v13158 = vadd.f32 %v12452, %v12920
  %v13159 = vadd.f32 %v12453, %v12925
  %v13160 = vadd.f32 %v12454, %v12930
  %v13161 = vadd.f32 %v12455, %v12935
  %v13162 = vadd.f32 %v12456, %v12940
  %v13163 = vadd.f32 %v12457, %v12945
  %v13164 = vadd.f32 %v12458, %v12950
  %v13165 = vadd.f32 %v12459, %v12955
  %v13166 = vadd.f32 %v12460, %v12960
  %v13167 = vadd.f32 %v12461, %v12965
  %v13168 = vadd.f32 %v12462, %v12970
  %v13169 = vadd.f32 %v12463, %v12975
  %v13170 = vadd.f32 %v12464, %v12980
  %v13171 = vadd.f32 %v12465, %v12985
  %v13172 = vadd.f32 %v12466, %v12990
  %v13173 = vadd.f32 %v12467, %v12995
  %v13174 = vadd.f32 %v12468, %v13000
  %v13175 = vadd.f32 %v12469, %v13005
  %v13176 = vadd.f32 %v12470, %v13010
  %v13177 = vadd.f32 %v12471, %v13015
  %v13178 = vadd.f32 %v12472, %v13020
  %v13179 = vadd.f32 %v12473, %v13025
  %v13180 = vadd.f32 %v12474, %v13030
  %v13181 = vadd.f32 %v12475, %v13035
  %v13182 = vadd.f32 %v12476, %v13040
  %v13183 = vadd.f32 %v12477, %v13045
  %v13184 = vadd.f32 %v12478, %v13050
  %v13185 = vadd.f32 %v12479, %v13055
  %v13186 = vadd.f32 %v12480, %v13060
  %v13187 = vadd.f32 %v12481, %v13065
  %v13188 = vadd.f32 %v12482, %v13070
  %v13189 = vadd.f32 %v12483, %v13075
  %v13190 = vadd.f32 %v12484, %v13080
  %v13191 = vadd.f32 %v12485, %v13085
  %v13192 = vadd.f32 %v12486, %v13090
  %v13193 = vadd.f32 %v12487, %v13095
  %v13194 = vadd.f32 %v12488, %v13100
  %v13195 = vadd.f32 %v12489, %v13105
  %v13196 = vadd.f32 %v12490, %v13110
  %v13197 = vadd.f32 %v12491, %v13115
  %v13198 = vadd.f32 %v12492, %v13120
  %v13199 = vadd.f32 %v12493, %v13125
  %v13200 = vadd.f32 %v12494, %v13130
  %v13201 = vadd.f32 %v12495, %v13135
  %v13202 = vadd.f32 %v13138, %v13139
  %v13203 = vadd.f32 %v13202, %v13140
  %v13204 = vadd.f32 %v13203, %v13141
  %v13205 = vadd.f32 %v13204, %v13142
  %v13206 = vadd.f32 %v13205, %v13143
  %v13207 = vadd.f32 %v13206, %v13144
  %v13208 = vadd.f32 %v13207, %v13145
  %v13209 = vadd.f32 %v13208, %v13146
  %v13210 = vadd.f32 %v13209, %v13147
  %v13211 = vadd.f32 %v13210, %v13148
  %v13212 = vadd.f32 %v13211, %v13149
  %v13213 = vadd.f32 %v13212, %v13150
  %v13214 = vadd.f32 %v13213, %v13151
  %v13215 = vadd.f32 %v13214, %v13152
  %v13216 = vadd.f32 %v13215, %v13153
  %v13217 = vadd.f32 %v13216, %v13154
  %v13218 = vadd.f32 %v13217, %v13155
  %v13219 = vadd.f32 %v13218, %v13156
  %v13220 = vadd.f32 %v13219, %v13157
  %v13221 = vadd.f32 %v13220, %v13158
  %v13222 = vadd.f32 %v13221, %v13159
  %v13223 = vadd.f32 %v13222, %v13160
  %v13224 = vadd.f32 %v13223, %v13161
  %v13225 = vadd.f32 %v13224, %v13162
  %v13226 = vadd.f32 %v13225, %v13163
  %v13227 = vadd.f32 %v13226, %v13164
  %v13228 = vadd.f32 %v13227, %v13165
  %v13229 = vadd.f32 %v13228, %v13166
  %v13230 = vadd.f32 %v13229, %v13167
  %v13231 = vadd.f32 %v13230, %v13168
  %v13232 = vadd.f32 %v13231, %v13169
  %v13233 = vadd.f32 %v13232, %v13170
  %v13234 = vadd.f32 %v13233, %v13171
  %v13235 = vadd.f32 %v13234, %v13172
  %v13236 = vadd.f32 %v13235, %v13173
  %v13237 = vadd.f32 %v13236, %v13174
  %v13238 = vadd.f32 %v13237, %v13175
  %v13239 = vadd.f32 %v13238, %v13176
  %v13240 = vadd.f32 %v13239, %v13177
  %v13241 = vadd.f32 %v13240, %v13178
  %v13242 = vadd.f32 %v13241, %v13179
  %v13243 = vadd.f32 %v13242, %v13180
  %v13244 = vadd.f32 %v13243, %v13181
  %v13245 = vadd.f32 %v13244, %v13182
  %v13246 = vadd.f32 %v13245, %v13183
  %v13247 = vadd.f32 %v13246, %v13184
  %v13248 = vadd.f32 %v13247, %v13185
  %v13249 = vadd.f32 %v13248, %v13186
  %v13250 = vadd.f32 %v13249, %v13187
  %v13251 = vadd.f32 %v13250, %v13188
  %v13252 = vadd.f32 %v13251, %v13189
  %v13253 = vadd.f32 %v13252, %v13190
  %v13254 = vadd.f32 %v13253, %v13191
  %v13255 = vadd.f32 %v13254, %v13192
  %v13256 = vadd.f32 %v13255, %v13193
  %v13257 = vadd.f32 %v13256, %v13194
  %v13258 = vadd.f32 %v13257, %v13195
  %v13259 = vadd.f32 %v13258, %v13196
  %v13260 = vadd.f32 %v13259, %v13197
  %v13261 = vadd.f32 %v13260, %v13198
  %v13262 = vadd.f32 %v13261, %v13199
  %v13263 = vadd.f32 %v13262, %v13200
  %v13264 = vadd.f32 %v13263, %v13201
  %v13265 = vrot.slane %v13264, 4
  %v13266 = vadd.f32 %v13264, %v13265
  %v13267 = vrot.slane %v13266, 2
  %v13268 = vadd.f32 %v13266, %v13267
  %v13269 = vrot.slane %v13268, 1
  %v13270 = vadd.f32 %v13268, %v13269
  %v13271 = vmul.f32 %v13138, %v13138
  %v13272 = vmul.f32 %v13139, %v13139
  %v13273 = vmul.f32 %v13140, %v13140
  %v13274 = vmul.f32 %v13141, %v13141
  %v13275 = vmul.f32 %v13142, %v13142
  %v13276 = vmul.f32 %v13143, %v13143
  %v13277 = vmul.f32 %v13144, %v13144
  %v13278 = vmul.f32 %v13145, %v13145
  %v13279 = vmul.f32 %v13146, %v13146
  %v13280 = vmul.f32 %v13147, %v13147
  %v13281 = vmul.f32 %v13148, %v13148
  %v13282 = vmul.f32 %v13149, %v13149
  %v13283 = vmul.f32 %v13150, %v13150
  %v13284 = vmul.f32 %v13151, %v13151
  %v13285 = vmul.f32 %v13152, %v13152
  %v13286 = vmul.f32 %v13153, %v13153
  %v13287 = vmul.f32 %v13154, %v13154
  %v13288 = vmul.f32 %v13155, %v13155
  %v13289 = vmul.f32 %v13156, %v13156
  %v13290 = vmul.f32 %v13157, %v13157
  %v13291 = vmul.f32 %v13158, %v13158
  %v13292 = vmul.f32 %v13159, %v13159
  %v13293 = vmul.f32 %v13160, %v13160
  %v13294 = vmul.f32 %v13161, %v13161
  %v13295 = vmul.f32 %v13162, %v13162
  %v13296 = vmul.f32 %v13163, %v13163
  %v13297 = vmul.f32 %v13164, %v13164
  %v13298 = vmul.f32 %v13165, %v13165
  %v13299 = vmul.f32 %v13166, %v13166
  %v13300 = vmul.f32 %v13167, %v13167
  %v13301 = vmul.f32 %v13168, %v13168
  %v13302 = vmul.f32 %v13169, %v13169
  %v13303 = vmul.f32 %v13170, %v13170
  %v13304 = vmul.f32 %v13171, %v13171
  %v13305 = vmul.f32 %v13172, %v13172
  %v13306 = vmul.f32 %v13173, %v13173
  %v13307 = vmul.f32 %v13174, %v13174
  %v13308 = vmul.f32 %v13175, %v13175
  %v13309 = vmul.f32 %v13176, %v13176
  %v13310 = vmul.f32 %v13177, %v13177
  %v13311 = vmul.f32 %v13178, %v13178
  %v13312 = vmul.f32 %v13179, %v13179
  %v13313 = vmul.f32 %v13180, %v13180
  %v13314 = vmul.f32 %v13181, %v13181
  %v13315 = vmul.f32 %v13182, %v13182
  %v13316 = vmul.f32 %v13183, %v13183
  %v13317 = vmul.f32 %v13184, %v13184
  %v13318 = vmul.f32 %v13185, %v13185
  %v13319 = vmul.f32 %v13186, %v13186
  %v13320 = vmul.f32 %v13187, %v13187
  %v13321 = vmul.f32 %v13188, %v13188
  %v13322 = vmul.f32 %v13189, %v13189
  %v13323 = vmul.f32 %v13190, %v13190
  %v13324 = vmul.f32 %v13191, %v13191
  %v13325 = vmul.f32 %v13192, %v13192
  %v13326 = vmul.f32 %v13193, %v13193
  %v13327 = vmul.f32 %v13194, %v13194
  %v13328 = vmul.f32 %v13195, %v13195
  %v13329 = vmul.f32 %v13196, %v13196
  %v13330 = vmul.f32 %v13197, %v13197
  %v13331 = vmul.f32 %v13198, %v13198
  %v13332 = vmul.f32 %v13199, %v13199
  %v13333 = vmul.f32 %v13200, %v13200
  %v13334 = vmul.f32 %v13201, %v13201
  %v13335 = vadd.f32 %v13271, %v13272
  %v13336 = vadd.f32 %v13335, %v13273
  %v13337 = vadd.f32 %v13336, %v13274
  %v13338 = vadd.f32 %v13337, %v13275
  %v13339 = vadd.f32 %v13338, %v13276
  %v13340 = vadd.f32 %v13339, %v13277
  %v13341 = vadd.f32 %v13340, %v13278
  %v13342 = vadd.f32 %v13341, %v13279
  %v13343 = vadd.f32 %v13342, %v13280
  %v13344 = vadd.f32 %v13343, %v13281
  %v13345 = vadd.f32 %v13344, %v13282
  %v13346 = vadd.f32 %v13345, %v13283
  %v13347 = vadd.f32 %v13346, %v13284
  %v13348 = vadd.f32 %v13347, %v13285
  %v13349 = vadd.f32 %v13348, %v13286
  %v13350 = vadd.f32 %v13349, %v13287
  %v13351 = vadd.f32 %v13350, %v13288
  %v13352 = vadd.f32 %v13351, %v13289
  %v13353 = vadd.f32 %v13352, %v13290
  %v13354 = vadd.f32 %v13353, %v13291
  %v13355 = vadd.f32 %v13354, %v13292
  %v13356 = vadd.f32 %v13355, %v13293
  %v13357 = vadd.f32 %v13356, %v13294
  %v13358 = vadd.f32 %v13357, %v13295
  %v13359 = vadd.f32 %v13358, %v13296
  %v13360 = vadd.f32 %v13359, %v13297
  %v13361 = vadd.f32 %v13360, %v13298
  %v13362 = vadd.f32 %v13361, %v13299
  %v13363 = vadd.f32 %v13362, %v13300
  %v13364 = vadd.f32 %v13363, %v13301
  %v13365 = vadd.f32 %v13364, %v13302
  %v13366 = vadd.f32 %v13365, %v13303
  %v13367 = vadd.f32 %v13366, %v13304
  %v13368 = vadd.f32 %v13367, %v13305
  %v13369 = vadd.f32 %v13368, %v13306
  %v13370 = vadd.f32 %v13369, %v13307
  %v13371 = vadd.f32 %v13370, %v13308
  %v13372 = vadd.f32 %v13371, %v13309
  %v13373 = vadd.f32 %v13372, %v13310
  %v13374 = vadd.f32 %v13373, %v13311
  %v13375 = vadd.f32 %v13374, %v13312
  %v13376 = vadd.f32 %v13375, %v13313
  %v13377 = vadd.f32 %v13376, %v13314
  %v13378 = vadd.f32 %v13377, %v13315
  %v13379 = vadd.f32 %v13378, %v13316
  %v13380 = vadd.f32 %v13379, %v13317
  %v13381 = vadd.f32 %v13380, %v13318
  %v13382 = vadd.f32 %v13381, %v13319
  %v13383 = vadd.f32 %v13382, %v13320
  %v13384 = vadd.f32 %v13383, %v13321
  %v13385 = vadd.f32 %v13384, %v13322
  %v13386 = vadd.f32 %v13385, %v13323
  %v13387 = vadd.f32 %v13386, %v13324
  %v13388 = vadd.f32 %v13387, %v13325
  %v13389 = vadd.f32 %v13388, %v13326
  %v13390 = vadd.f32 %v13389, %v13327
  %v13391 = vadd.f32 %v13390, %v13328
  %v13392 = vadd.f32 %v13391, %v13329
  %v13393 = vadd.f32 %v13392, %v13330
  %v13394 = vadd.f32 %v13393, %v13331
  %v13395 = vadd.f32 %v13394, %v13332
  %v13396 = vadd.f32 %v13395, %v13333
  %v13397 = vadd.f32 %v13396, %v13334
  %v13398 = vrot.slane %v13397, 4
  %v13399 = vadd.f32 %v13397, %v13398
  %v13400 = vrot.slane %v13399, 2
  %v13401 = vadd.f32 %v13399, %v13400
  %v13402 = vrot.slane %v13401, 1
  %v13403 = vadd.f32 %v13401, %v13402
  %v13404 = vmul.f32 %v13270, 0.001953125
  %v13405 = vmul.f32 %v13403, 0.001953125
  %v13406 = vmul.f32 %v13404, %v13404
  %v13407 = vsub.f32 %v13405, %v13406
  %v13408 = vmax.f32 %v13407, 0.0
  %v13409 = vadd.f32 %v13408, 1e-05
  %v13410 = vrsqrt.pop %v13409
  %v13411 = vmul.f32 %v13410, %v6974
  %v13412 = vmul.f32 %v13404, %v13411
  %v13413 = vsub.f32 %v6975, %v13412
  %v13414 = vlaneseq
  %v13415 = vshrl.u32 %v13414, 7
  %v13416 = vsub.s32 0, %v13415
  %v13417 = vrot.slane %v13411, %v13416
  %v13418 = vmul.f32 %v13138, %v13417
  %v13419 = vmul.f32 %v13139, %v13417
  %v13420 = vmul.f32 %v13140, %v13417
  %v13421 = vmul.f32 %v13141, %v13417
  %v13422 = vmul.f32 %v13142, %v13417
  %v13423 = vmul.f32 %v13143, %v13417
  %v13424 = vmul.f32 %v13144, %v13417
  %v13425 = vmul.f32 %v13145, %v13417
  %v13426 = vmul.f32 %v13146, %v13417
  %v13427 = vmul.f32 %v13147, %v13417
  %v13428 = vmul.f32 %v13148, %v13417
  %v13429 = vmul.f32 %v13149, %v13417
  %v13430 = vmul.f32 %v13150, %v13417
  %v13431 = vmul.f32 %v13151, %v13417
  %v13432 = vmul.f32 %v13152, %v13417
  %v13433 = vmul.f32 %v13153, %v13417
  %v13434 = vmul.f32 %v13154, %v13417
  %v13435 = vmul.f32 %v13155, %v13417
  %v13436 = vmul.f32 %v13156, %v13417
  %v13437 = vmul.f32 %v13157, %v13417
  %v13438 = vmul.f32 %v13158, %v13417
  %v13439 = vmul.f32 %v13159, %v13417
  %v13440 = vmul.f32 %v13160, %v13417
  %v13441 = vmul.f32 %v13161, %v13417
  %v13442 = vmul.f32 %v13162, %v13417
  %v13443 = vmul.f32 %v13163, %v13417
  %v13444 = vmul.f32 %v13164, %v13417
  %v13445 = vmul.f32 %v13165, %v13417
  %v13446 = vmul.f32 %v13166, %v13417
  %v13447 = vmul.f32 %v13167, %v13417
  %v13448 = vmul.f32 %v13168, %v13417
  %v13449 = vmul.f32 %v13169, %v13417
  %v13450 = vmul.f32 %v13170, %v13417
  %v13451 = vmul.f32 %v13171, %v13417
  %v13452 = vmul.f32 %v13172, %v13417
  %v13453 = vmul.f32 %v13173, %v13417
  %v13454 = vmul.f32 %v13174, %v13417
  %v13455 = vmul.f32 %v13175, %v13417
  %v13456 = vmul.f32 %v13176, %v13417
  %v13457 = vmul.f32 %v13177, %v13417
  %v13458 = vmul.f32 %v13178, %v13417
  %v13459 = vmul.f32 %v13179, %v13417
  %v13460 = vmul.f32 %v13180, %v13417
  %v13461 = vmul.f32 %v13181, %v13417
  %v13462 = vmul.f32 %v13182, %v13417
  %v13463 = vmul.f32 %v13183, %v13417
  %v13464 = vmul.f32 %v13184, %v13417
  %v13465 = vmul.f32 %v13185, %v13417
  %v13466 = vmul.f32 %v13186, %v13417
  %v13467 = vmul.f32 %v13187, %v13417
  %v13468 = vmul.f32 %v13188, %v13417
  %v13469 = vmul.f32 %v13189, %v13417
  %v13470 = vmul.f32 %v13190, %v13417
  %v13471 = vmul.f32 %v13191, %v13417
  %v13472 = vmul.f32 %v13192, %v13417
  %v13473 = vmul.f32 %v13193, %v13417
  %v13474 = vmul.f32 %v13194, %v13417
  %v13475 = vmul.f32 %v13195, %v13417
  %v13476 = vmul.f32 %v13196, %v13417
  %v13477 = vmul.f32 %v13197, %v13417
  %v13478 = vmul.f32 %v13198, %v13417
  %v13479 = vmul.f32 %v13199, %v13417
  %v13480 = vmul.f32 %v13200, %v13417
  %v13481 = vmul.f32 %v13201, %v13417
  %v13483 = vlaneseq
  %v13484 = vshrl.u32 %v13483, 7
  %v13485 = vsub.s32 0, %v13484
  %v13486 = vrot.slane %v13413, %v13485
  %v13488 = vadd.f32 %v13418, %v13486
  %v13489 = vadd.f32 %v13419, %v13486
  %v13490 = vadd.f32 %v13420, %v13486
  %v13491 = vadd.f32 %v13421, %v13486
  %v13492 = vadd.f32 %v13422, %v13486
  %v13493 = vadd.f32 %v13423, %v13486
  %v13494 = vadd.f32 %v13424, %v13486
  %v13495 = vadd.f32 %v13425, %v13486
  %v13496 = vadd.f32 %v13426, %v13486
  %v13497 = vadd.f32 %v13427, %v13486
  %v13498 = vadd.f32 %v13428, %v13486
  %v13499 = vadd.f32 %v13429, %v13486
  %v13500 = vadd.f32 %v13430, %v13486
  %v13501 = vadd.f32 %v13431, %v13486
  %v13502 = vadd.f32 %v13432, %v13486
  %v13503 = vadd.f32 %v13433, %v13486
  %v13504 = vadd.f32 %v13434, %v13486
  %v13505 = vadd.f32 %v13435, %v13486
  %v13506 = vadd.f32 %v13436, %v13486
  %v13507 = vadd.f32 %v13437, %v13486
  %v13508 = vadd.f32 %v13438, %v13486
  %v13509 = vadd.f32 %v13439, %v13486
  %v13510 = vadd.f32 %v13440, %v13486
  %v13511 = vadd.f32 %v13441, %v13486
  %v13512 = vadd.f32 %v13442, %v13486
  %v13513 = vadd.f32 %v13443, %v13486
  %v13514 = vadd.f32 %v13444, %v13486
  %v13515 = vadd.f32 %v13445, %v13486
  %v13516 = vadd.f32 %v13446, %v13486
  %v13517 = vadd.f32 %v13447, %v13486
  %v13518 = vadd.f32 %v13448, %v13486
  %v13519 = vadd.f32 %v13449, %v13486
  %v13520 = vadd.f32 %v13450, %v13486
  %v13521 = vadd.f32 %v13451, %v13486
  %v13522 = vadd.f32 %v13452, %v13486
  %v13523 = vadd.f32 %v13453, %v13486
  %v13524 = vadd.f32 %v13454, %v13486
  %v13525 = vadd.f32 %v13455, %v13486
  %v13526 = vadd.f32 %v13456, %v13486
  %v13527 = vadd.f32 %v13457, %v13486
  %v13528 = vadd.f32 %v13458, %v13486
  %v13529 = vadd.f32 %v13459, %v13486
  %v13530 = vadd.f32 %v13460, %v13486
  %v13531 = vadd.f32 %v13461, %v13486
  %v13532 = vadd.f32 %v13462, %v13486
  %v13533 = vadd.f32 %v13463, %v13486
  %v13534 = vadd.f32 %v13464, %v13486
  %v13535 = vadd.f32 %v13465, %v13486
  %v13536 = vadd.f32 %v13466, %v13486
  %v13537 = vadd.f32 %v13467, %v13486
  %v13538 = vadd.f32 %v13468, %v13486
  %v13539 = vadd.f32 %v13469, %v13486
  %v13540 = vadd.f32 %v13470, %v13486
  %v13541 = vadd.f32 %v13471, %v13486
  %v13542 = vadd.f32 %v13472, %v13486
  %v13543 = vadd.f32 %v13473, %v13486
  %v13544 = vadd.f32 %v13474, %v13486
  %v13545 = vadd.f32 %v13475, %v13486
  %v13546 = vadd.f32 %v13476, %v13486
  %v13547 = vadd.f32 %v13477, %v13486
  %v13548 = vadd.f32 %v13478, %v13486
  %v13549 = vadd.f32 %v13479, %v13486
  %v13550 = vadd.f32 %v13480, %v13486
  %v13551 = vadd.f32 %v13481, %v13486
  %v13552 = vld [vmem:[%s0] sm:$0xff]
  %v13553 = vld [vmem:[%s0 + $0x8] sm:$0xff]
  %v13554 = vld [vmem:[%s0 + $0x10] sm:$0xff]
  %v13555 = vld [vmem:[%s0 + $0x18] sm:$0xff]
  %v13556 = vld [vmem:[%s0 + $0x20] sm:$0xff]
  %v13557 = vld [vmem:[%s0 + $0x28] sm:$0xff]
  %v13558 = vld [vmem:[%s0 + $0x30] sm:$0xff]
  %v13559 = vld [vmem:[%s0 + $0x38] sm:$0xff]
  %v13560 = vld [vmem:[%s0 + $0x40] sm:$0xff]
  %v13561 = vld [vmem:[%s0 + $0x48] sm:$0xff]
  %v13562 = vld [vmem:[%s0 + $0x50] sm:$0xff]
  %v13563 = vld [vmem:[%s0 + $0x58] sm:$0xff]
  %v13564 = vld [vmem:[%s0 + $0x60] sm:$0xff]
  %v13565 = vld [vmem:[%s0 + $0x68] sm:$0xff]
  %v13566 = vld [vmem:[%s0 + $0x70] sm:$0xff]
  %v13567 = vld [vmem:[%s0 + $0x78] sm:$0xff]
  %v13568 = vld [vmem:[%s0 + $0x80] sm:$0xff]
  %v13569 = vld [vmem:[%s0 + $0x88] sm:$0xff]
  %v13570 = vld [vmem:[%s0 + $0x90] sm:$0xff]
  %v13571 = vld [vmem:[%s0 + $0x98] sm:$0xff]
  %v13572 = vld [vmem:[%s0 + $0xa0] sm:$0xff]
  %v13573 = vld [vmem:[%s0 + $0xa8] sm:$0xff]
  %v13574 = vld [vmem:[%s0 + $0xb0] sm:$0xff]
  %v13575 = vld [vmem:[%s0 + $0xb8] sm:$0xff]
  %v13576 = vld [vmem:[%s0 + $0xc0] sm:$0xff]
  %v13577 = vld [vmem:[%s0 + $0xc8] sm:$0xff]
  %v13578 = vld [vmem:[%s0 + $0xd0] sm:$0xff]
  %v13579 = vld [vmem:[%s0 + $0xd8] sm:$0xff]
  %v13580 = vld [vmem:[%s0 + $0xe0] sm:$0xff]
  %v13581 = vld [vmem:[%s0 + $0xe8] sm:$0xff]
  %v13582 = vld [vmem:[%s0 + $0xf0] sm:$0xff]
  %v13583 = vld [vmem:[%s0 + $0xf8] sm:$0xff]
  %v13584 = vld [vmem:[%s0 + $0x100] sm:$0xff]
  %v13585 = vld [vmem:[%s0 + $0x108] sm:$0xff]
  %v13586 = vld [vmem:[%s0 + $0x110] sm:$0xff]
  %v13587 = vld [vmem:[%s0 + $0x118] sm:$0xff]
  %v13588 = vld [vmem:[%s0 + $0x120] sm:$0xff]
  %v13589 = vld [vmem:[%s0 + $0x128] sm:$0xff]
  %v13590 = vld [vmem:[%s0 + $0x130] sm:$0xff]
  %v13591 = vld [vmem:[%s0 + $0x138] sm:$0xff]
  %v13592 = vld [vmem:[%s0 + $0x140] sm:$0xff]
  %v13593 = vld [vmem:[%s0 + $0x148] sm:$0xff]
  %v13594 = vld [vmem:[%s0 + $0x150] sm:$0xff]
  %v13595 = vld [vmem:[%s0 + $0x158] sm:$0xff]
  %v13596 = vld [vmem:[%s0 + $0x160] sm:$0xff]
  %v13597 = vld [vmem:[%s0 + $0x168] sm:$0xff]
  %v13598 = vld [vmem:[%s0 + $0x170] sm:$0xff]
  %v13599 = vld [vmem:[%s0 + $0x178] sm:$0xff]
  %v13600 = vld [vmem:[%s0 + $0x180] sm:$0xff]
  %v13601 = vld [vmem:[%s0 + $0x188] sm:$0xff]
  %v13602 = vld [vmem:[%s0 + $0x190] sm:$0xff]
  %v13603 = vld [vmem:[%s0 + $0x198] sm:$0xff]
  %v13604 = vld [vmem:[%s0 + $0x1a0] sm:$0xff]
  %v13605 = vld [vmem:[%s0 + $0x1a8] sm:$0xff]
  %v13606 = vld [vmem:[%s0 + $0x1b0] sm:$0xff]
  %v13607 = vld [vmem:[%s0 + $0x1b8] sm:$0xff]
  %v13608 = vld [vmem:[%s0 + $0x1c0] sm:$0xff]
  %v13609 = vld [vmem:[%s0 + $0x1c8] sm:$0xff]
  %v13610 = vld [vmem:[%s0 + $0x1d0] sm:$0xff]
  %v13611 = vld [vmem:[%s0 + $0x1d8] sm:$0xff]
  %v13612 = vld [vmem:[%s0 + $0x1e0] sm:$0xff]
  %v13613 = vld [vmem:[%s0 + $0x1e8] sm:$0xff]
  %v13614 = vld [vmem:[%s0 + $0x1f0] sm:$0xff]
  %v13615 = vld [vmem:[%s0 + $0x1f8] sm:$0xff]
  %v13616 = vadd.f32 %v13552, %v13488
  %v13617 = vadd.f32 %v13553, %v13489
  %v13618 = vadd.f32 %v13554, %v13490
  %v13619 = vadd.f32 %v13555, %v13491
  %v13620 = vadd.f32 %v13556, %v13492
  %v13621 = vadd.f32 %v13557, %v13493
  %v13622 = vadd.f32 %v13558, %v13494
  %v13623 = vadd.f32 %v13559, %v13495
  %v13624 = vadd.f32 %v13560, %v13496
  %v13625 = vadd.f32 %v13561, %v13497
  %v13626 = vadd.f32 %v13562, %v13498
  %v13627 = vadd.f32 %v13563, %v13499
  %v13628 = vadd.f32 %v13564, %v13500
  %v13629 = vadd.f32 %v13565, %v13501
  %v13630 = vadd.f32 %v13566, %v13502
  %v13631 = vadd.f32 %v13567, %v13503
  %v13632 = vadd.f32 %v13568, %v13504
  %v13633 = vadd.f32 %v13569, %v13505
  %v13634 = vadd.f32 %v13570, %v13506
  %v13635 = vadd.f32 %v13571, %v13507
  %v13636 = vadd.f32 %v13572, %v13508
  %v13637 = vadd.f32 %v13573, %v13509
  %v13638 = vadd.f32 %v13574, %v13510
  %v13639 = vadd.f32 %v13575, %v13511
  %v13640 = vadd.f32 %v13576, %v13512
  %v13641 = vadd.f32 %v13577, %v13513
  %v13642 = vadd.f32 %v13578, %v13514
  %v13643 = vadd.f32 %v13579, %v13515
  %v13644 = vadd.f32 %v13580, %v13516
  %v13645 = vadd.f32 %v13581, %v13517
  %v13646 = vadd.f32 %v13582, %v13518
  %v13647 = vadd.f32 %v13583, %v13519
  %v13648 = vadd.f32 %v13584, %v13520
  %v13649 = vadd.f32 %v13585, %v13521
  %v13650 = vadd.f32 %v13586, %v13522
  %v13651 = vadd.f32 %v13587, %v13523
  %v13652 = vadd.f32 %v13588, %v13524
  %v13653 = vadd.f32 %v13589, %v13525
  %v13654 = vadd.f32 %v13590, %v13526
  %v13655 = vadd.f32 %v13591, %v13527
  %v13656 = vadd.f32 %v13592, %v13528
  %v13657 = vadd.f32 %v13593, %v13529
  %v13658 = vadd.f32 %v13594, %v13530
  %v13659 = vadd.f32 %v13595, %v13531
  %v13660 = vadd.f32 %v13596, %v13532
  %v13661 = vadd.f32 %v13597, %v13533
  %v13662 = vadd.f32 %v13598, %v13534
  %v13663 = vadd.f32 %v13599, %v13535
  %v13664 = vadd.f32 %v13600, %v13536
  %v13665 = vadd.f32 %v13601, %v13537
  %v13666 = vadd.f32 %v13602, %v13538
  %v13667 = vadd.f32 %v13603, %v13539
  %v13668 = vadd.f32 %v13604, %v13540
  %v13669 = vadd.f32 %v13605, %v13541
  %v13670 = vadd.f32 %v13606, %v13542
  %v13671 = vadd.f32 %v13607, %v13543
  %v13672 = vadd.f32 %v13608, %v13544
  %v13673 = vadd.f32 %v13609, %v13545
  %v13674 = vadd.f32 %v13610, %v13546
  %v13675 = vadd.f32 %v13611, %v13547
  %v13676 = vadd.f32 %v13612, %v13548
  %v13677 = vadd.f32 %v13613, %v13549
  %v13678 = vadd.f32 %v13614, %v13550
  %v13679 = vadd.f32 %v13615, %v13551
  %v13680 = vmax.f32 %v13616, 0.0
  %v13681 = vmax.f32 %v13617, 0.0
  %v13682 = vmax.f32 %v13618, 0.0
  %v13683 = vmax.f32 %v13619, 0.0
  %v13684 = vmax.f32 %v13620, 0.0
  %v13685 = vmax.f32 %v13621, 0.0
  %v13686 = vmax.f32 %v13622, 0.0
  %v13687 = vmax.f32 %v13623, 0.0
  %v13688 = vmax.f32 %v13624, 0.0
  %v13689 = vmax.f32 %v13625, 0.0
  %v13690 = vmax.f32 %v13626, 0.0
  %v13691 = vmax.f32 %v13627, 0.0
  %v13692 = vmax.f32 %v13628, 0.0
  %v13693 = vmax.f32 %v13629, 0.0
  %v13694 = vmax.f32 %v13630, 0.0
  %v13695 = vmax.f32 %v13631, 0.0
  %v13696 = vmax.f32 %v13632, 0.0
  %v13697 = vmax.f32 %v13633, 0.0
  %v13698 = vmax.f32 %v13634, 0.0
  %v13699 = vmax.f32 %v13635, 0.0
  %v13700 = vmax.f32 %v13636, 0.0
  %v13701 = vmax.f32 %v13637, 0.0
  %v13702 = vmax.f32 %v13638, 0.0
  %v13703 = vmax.f32 %v13639, 0.0
  %v13704 = vmax.f32 %v13640, 0.0
  %v13705 = vmax.f32 %v13641, 0.0
  %v13706 = vmax.f32 %v13642, 0.0
  %v13707 = vmax.f32 %v13643, 0.0
  %v13708 = vmax.f32 %v13644, 0.0
  %v13709 = vmax.f32 %v13645, 0.0
  %v13710 = vmax.f32 %v13646, 0.0
  %v13711 = vmax.f32 %v13647, 0.0
  %v13712 = vmax.f32 %v13648, 0.0
  %v13713 = vmax.f32 %v13649, 0.0
  %v13714 = vmax.f32 %v13650, 0.0
  %v13715 = vmax.f32 %v13651, 0.0
  %v13716 = vmax.f32 %v13652, 0.0
  %v13717 = vmax.f32 %v13653, 0.0
  %v13718 = vmax.f32 %v13654, 0.0
  %v13719 = vmax.f32 %v13655, 0.0
  %v13720 = vmax.f32 %v13656, 0.0
  %v13721 = vmax.f32 %v13657, 0.0
  %v13722 = vmax.f32 %v13658, 0.0
  %v13723 = vmax.f32 %v13659, 0.0
  %v13724 = vmax.f32 %v13660, 0.0
  %v13725 = vmax.f32 %v13661, 0.0
  %v13726 = vmax.f32 %v13662, 0.0
  %v13727 = vmax.f32 %v13663, 0.0
  %v13728 = vmax.f32 %v13664, 0.0
  %v13729 = vmax.f32 %v13665, 0.0
  %v13730 = vmax.f32 %v13666, 0.0
  %v13731 = vmax.f32 %v13667, 0.0
  %v13732 = vmax.f32 %v13668, 0.0
  %v13733 = vmax.f32 %v13669, 0.0
  %v13734 = vmax.f32 %v13670, 0.0
  %v13735 = vmax.f32 %v13671, 0.0
  %v13736 = vmax.f32 %v13672, 0.0
  %v13737 = vmax.f32 %v13673, 0.0
  %v13738 = vmax.f32 %v13674, 0.0
  %v13739 = vmax.f32 %v13675, 0.0
  %v13740 = vmax.f32 %v13676, 0.0
  %v13741 = vmax.f32 %v13677, 0.0
  %v13742 = vmax.f32 %v13678, 0.0
  %v13743 = vmax.f32 %v13679, 0.0
  %vm13744 = vcmask 31744
  %13745 = vst.msk [vmem:[%s7] sm:$0xff] %vm13744, %v13680
  %13746 = vst.msk [vmem:[%s7 + $0x8] sm:$0xff] %vm13744, %v13681
  %13747 = vst.msk [vmem:[%s7 + $0x10] sm:$0xff] %vm13744, %v13682
  %13748 = vst.msk [vmem:[%s7 + $0x18] sm:$0xff] %vm13744, %v13683
  %13749 = vst.msk [vmem:[%s7 + $0x20] sm:$0xff] %vm13744, %v13684
  %13750 = vst.msk [vmem:[%s7 + $0x28] sm:$0xff] %vm13744, %v13685
  %13751 = vst.msk [vmem:[%s7 + $0x30] sm:$0xff] %vm13744, %v13686
  %13752 = vst.msk [vmem:[%s7 + $0x38] sm:$0xff] %vm13744, %v13687
  %13753 = vst.msk [vmem:[%s7 + $0x40] sm:$0xff] %vm13744, %v13688
  %13754 = vst.msk [vmem:[%s7 + $0x48] sm:$0xff] %vm13744, %v13689
  %13755 = vst.msk [vmem:[%s7 + $0x50] sm:$0xff] %vm13744, %v13690
  %13756 = vst.msk [vmem:[%s7 + $0x58] sm:$0xff] %vm13744, %v13691
  %13757 = vst.msk [vmem:[%s7 + $0x60] sm:$0xff] %vm13744, %v13692
  %13758 = vst.msk [vmem:[%s7 + $0x68] sm:$0xff] %vm13744, %v13693
  %13759 = vst.msk [vmem:[%s7 + $0x70] sm:$0xff] %vm13744, %v13694
  %13760 = vst.msk [vmem:[%s7 + $0x78] sm:$0xff] %vm13744, %v13695
  %13761 = vst.msk [vmem:[%s7 + $0x80] sm:$0xff] %vm13744, %v13696
  %13762 = vst.msk [vmem:[%s7 + $0x88] sm:$0xff] %vm13744, %v13697
  %13763 = vst.msk [vmem:[%s7 + $0x90] sm:$0xff] %vm13744, %v13698
  %13764 = vst.msk [vmem:[%s7 + $0x98] sm:$0xff] %vm13744, %v13699
  %13765 = vst.msk [vmem:[%s7 + $0xa0] sm:$0xff] %vm13744, %v13700
  %13766 = vst.msk [vmem:[%s7 + $0xa8] sm:$0xff] %vm13744, %v13701
  %13767 = vst.msk [vmem:[%s7 + $0xb0] sm:$0xff] %vm13744, %v13702
  %13768 = vst.msk [vmem:[%s7 + $0xb8] sm:$0xff] %vm13744, %v13703
  %13769 = vst.msk [vmem:[%s7 + $0xc0] sm:$0xff] %vm13744, %v13704
  %13770 = vst.msk [vmem:[%s7 + $0xc8] sm:$0xff] %vm13744, %v13705
  %13771 = vst.msk [vmem:[%s7 + $0xd0] sm:$0xff] %vm13744, %v13706
  %13772 = vst.msk [vmem:[%s7 + $0xd8] sm:$0xff] %vm13744, %v13707
  %13773 = vst.msk [vmem:[%s7 + $0xe0] sm:$0xff] %vm13744, %v13708
  %13774 = vst.msk [vmem:[%s7 + $0xe8] sm:$0xff] %vm13744, %v13709
  %13775 = vst.msk [vmem:[%s7 + $0xf0] sm:$0xff] %vm13744, %v13710
  %13776 = vst.msk [vmem:[%s7 + $0xf8] sm:$0xff] %vm13744, %v13711
  %13777 = vst.msk [vmem:[%s7 + $0x100] sm:$0xff] %vm13744, %v13712
  %13778 = vst.msk [vmem:[%s7 + $0x108] sm:$0xff] %vm13744, %v13713
  %13779 = vst.msk [vmem:[%s7 + $0x110] sm:$0xff] %vm13744, %v13714
  %13780 = vst.msk [vmem:[%s7 + $0x118] sm:$0xff] %vm13744, %v13715
  %13781 = vst.msk [vmem:[%s7 + $0x120] sm:$0xff] %vm13744, %v13716
  %13782 = vst.msk [vmem:[%s7 + $0x128] sm:$0xff] %vm13744, %v13717
  %13783 = vst.msk [vmem:[%s7 + $0x130] sm:$0xff] %vm13744, %v13718
  %13784 = vst.msk [vmem:[%s7 + $0x138] sm:$0xff] %vm13744, %v13719
  %13785 = vst.msk [vmem:[%s7 + $0x140] sm:$0xff] %vm13744, %v13720
  %13786 = vst.msk [vmem:[%s7 + $0x148] sm:$0xff] %vm13744, %v13721
  %13787 = vst.msk [vmem:[%s7 + $0x150] sm:$0xff] %vm13744, %v13722
  %13788 = vst.msk [vmem:[%s7 + $0x158] sm:$0xff] %vm13744, %v13723
  %13789 = vst.msk [vmem:[%s7 + $0x160] sm:$0xff] %vm13744, %v13724
  %13790 = vst.msk [vmem:[%s7 + $0x168] sm:$0xff] %vm13744, %v13725
  %13791 = vst.msk [vmem:[%s7 + $0x170] sm:$0xff] %vm13744, %v13726
  %13792 = vst.msk [vmem:[%s7 + $0x178] sm:$0xff] %vm13744, %v13727
  %13793 = vst.msk [vmem:[%s7 + $0x180] sm:$0xff] %vm13744, %v13728
  %13794 = vst.msk [vmem:[%s7 + $0x188] sm:$0xff] %vm13744, %v13729
  %13795 = vst.msk [vmem:[%s7 + $0x190] sm:$0xff] %vm13744, %v13730
  %13796 = vst.msk [vmem:[%s7 + $0x198] sm:$0xff] %vm13744, %v13731
  %13797 = vst.msk [vmem:[%s7 + $0x1a0] sm:$0xff] %vm13744, %v13732
  %13798 = vst.msk [vmem:[%s7 + $0x1a8] sm:$0xff] %vm13744, %v13733
  %13799 = vst.msk [vmem:[%s7 + $0x1b0] sm:$0xff] %vm13744, %v13734
  %13800 = vst.msk [vmem:[%s7 + $0x1b8] sm:$0xff] %vm13744, %v13735
  %13801 = vst.msk [vmem:[%s7 + $0x1c0] sm:$0xff] %vm13744, %v13736
  %13802 = vst.msk [vmem:[%s7 + $0x1c8] sm:$0xff] %vm13744, %v13737
  %13803 = vst.msk [vmem:[%s7 + $0x1d0] sm:$0xff] %vm13744, %v13738
  %13804 = vst.msk [vmem:[%s7 + $0x1d8] sm:$0xff] %vm13744, %v13739
  %13805 = vst.msk [vmem:[%s7 + $0x1e0] sm:$0xff] %vm13744, %v13740
  %13806 = vst.msk [vmem:[%s7 + $0x1e8] sm:$0xff] %vm13744, %v13741
  %13807 = vst.msk [vmem:[%s7 + $0x1f0] sm:$0xff] %vm13744, %v13742
  %13808 = vst.msk [vmem:[%s7 + $0x1f8] sm:$0xff] %vm13744, %v13743
  %v13809 = vmax.f32 %v13488, 0.0
  %v13810 = vmax.f32 %v13489, 0.0
  %v13811 = vmax.f32 %v13490, 0.0
  %v13812 = vmax.f32 %v13491, 0.0
  %v13813 = vmax.f32 %v13492, 0.0
  %v13814 = vmax.f32 %v13493, 0.0
  %v13815 = vmax.f32 %v13494, 0.0
  %v13816 = vmax.f32 %v13495, 0.0
  %v13817 = vmax.f32 %v13496, 0.0
  %v13818 = vmax.f32 %v13497, 0.0
  %v13819 = vmax.f32 %v13498, 0.0
  %v13820 = vmax.f32 %v13499, 0.0
  %v13821 = vmax.f32 %v13500, 0.0
  %v13822 = vmax.f32 %v13501, 0.0
  %v13823 = vmax.f32 %v13502, 0.0
  %v13824 = vmax.f32 %v13503, 0.0
  %v13825 = vmax.f32 %v13504, 0.0
  %v13826 = vmax.f32 %v13505, 0.0
  %v13827 = vmax.f32 %v13506, 0.0
  %v13828 = vmax.f32 %v13507, 0.0
  %v13829 = vmax.f32 %v13508, 0.0
  %v13830 = vmax.f32 %v13509, 0.0
  %v13831 = vmax.f32 %v13510, 0.0
  %v13832 = vmax.f32 %v13511, 0.0
  %v13833 = vmax.f32 %v13512, 0.0
  %v13834 = vmax.f32 %v13513, 0.0
  %v13835 = vmax.f32 %v13514, 0.0
  %v13836 = vmax.f32 %v13515, 0.0
  %v13837 = vmax.f32 %v13516, 0.0
  %v13838 = vmax.f32 %v13517, 0.0
  %v13839 = vmax.f32 %v13518, 0.0
  %v13840 = vmax.f32 %v13519, 0.0
  %v13841 = vmax.f32 %v13520, 0.0
  %v13842 = vmax.f32 %v13521, 0.0
  %v13843 = vmax.f32 %v13522, 0.0
  %v13844 = vmax.f32 %v13523, 0.0
  %v13845 = vmax.f32 %v13524, 0.0
  %v13846 = vmax.f32 %v13525, 0.0
  %v13847 = vmax.f32 %v13526, 0.0
  %v13848 = vmax.f32 %v13527, 0.0
  %v13849 = vmax.f32 %v13528, 0.0
  %v13850 = vmax.f32 %v13529, 0.0
  %v13851 = vmax.f32 %v13530, 0.0
  %v13852 = vmax.f32 %v13531, 0.0
  %v13853 = vmax.f32 %v13532, 0.0
  %v13854 = vmax.f32 %v13533, 0.0
  %v13855 = vmax.f32 %v13534, 0.0
  %v13856 = vmax.f32 %v13535, 0.0
  %v13857 = vmax.f32 %v13536, 0.0
  %v13858 = vmax.f32 %v13537, 0.0
  %v13859 = vmax.f32 %v13538, 0.0
  %v13860 = vmax.f32 %v13539, 0.0
  %v13861 = vmax.f32 %v13540, 0.0
  %v13862 = vmax.f32 %v13541, 0.0
  %v13863 = vmax.f32 %v13542, 0.0
  %v13864 = vmax.f32 %v13543, 0.0
  %v13865 = vmax.f32 %v13544, 0.0
  %v13866 = vmax.f32 %v13545, 0.0
  %v13867 = vmax.f32 %v13546, 0.0
  %v13868 = vmax.f32 %v13547, 0.0
  %v13869 = vmax.f32 %v13548, 0.0
  %v13870 = vmax.f32 %v13549, 0.0
  %v13871 = vmax.f32 %v13550, 0.0
  %v13872 = vmax.f32 %v13551, 0.0
  %13873 = vst.msk [vmem:[%s8] sm:$0xff] %vm13744, %v13809
  %13874 = vst.msk [vmem:[%s8 + $0x8] sm:$0xff] %vm13744, %v13810
  %13875 = vst.msk [vmem:[%s8 + $0x10] sm:$0xff] %vm13744, %v13811
  %13876 = vst.msk [vmem:[%s8 + $0x18] sm:$0xff] %vm13744, %v13812
  %13877 = vst.msk [vmem:[%s8 + $0x20] sm:$0xff] %vm13744, %v13813
  %13878 = vst.msk [vmem:[%s8 + $0x28] sm:$0xff] %vm13744, %v13814
  %13879 = vst.msk [vmem:[%s8 + $0x30] sm:$0xff] %vm13744, %v13815
  %13880 = vst.msk [vmem:[%s8 + $0x38] sm:$0xff] %vm13744, %v13816
  %13881 = vst.msk [vmem:[%s8 + $0x40] sm:$0xff] %vm13744, %v13817
  %13882 = vst.msk [vmem:[%s8 + $0x48] sm:$0xff] %vm13744, %v13818
  %13883 = vst.msk [vmem:[%s8 + $0x50] sm:$0xff] %vm13744, %v13819
  %13884 = vst.msk [vmem:[%s8 + $0x58] sm:$0xff] %vm13744, %v13820
  %13885 = vst.msk [vmem:[%s8 + $0x60] sm:$0xff] %vm13744, %v13821
  %13886 = vst.msk [vmem:[%s8 + $0x68] sm:$0xff] %vm13744, %v13822
  %13887 = vst.msk [vmem:[%s8 + $0x70] sm:$0xff] %vm13744, %v13823
  %13888 = vst.msk [vmem:[%s8 + $0x78] sm:$0xff] %vm13744, %v13824
  %13889 = vst.msk [vmem:[%s8 + $0x80] sm:$0xff] %vm13744, %v13825
  %13890 = vst.msk [vmem:[%s8 + $0x88] sm:$0xff] %vm13744, %v13826
  %13891 = vst.msk [vmem:[%s8 + $0x90] sm:$0xff] %vm13744, %v13827
  %13892 = vst.msk [vmem:[%s8 + $0x98] sm:$0xff] %vm13744, %v13828
  %13893 = vst.msk [vmem:[%s8 + $0xa0] sm:$0xff] %vm13744, %v13829
  %13894 = vst.msk [vmem:[%s8 + $0xa8] sm:$0xff] %vm13744, %v13830
  %13895 = vst.msk [vmem:[%s8 + $0xb0] sm:$0xff] %vm13744, %v13831
  %13896 = vst.msk [vmem:[%s8 + $0xb8] sm:$0xff] %vm13744, %v13832
  %13897 = vst.msk [vmem:[%s8 + $0xc0] sm:$0xff] %vm13744, %v13833
  %13898 = vst.msk [vmem:[%s8 + $0xc8] sm:$0xff] %vm13744, %v13834
  %13899 = vst.msk [vmem:[%s8 + $0xd0] sm:$0xff] %vm13744, %v13835
  %13900 = vst.msk [vmem:[%s8 + $0xd8] sm:$0xff] %vm13744, %v13836
  %13901 = vst.msk [vmem:[%s8 + $0xe0] sm:$0xff] %vm13744, %v13837
  %13902 = vst.msk [vmem:[%s8 + $0xe8] sm:$0xff] %vm13744, %v13838
  %13903 = vst.msk [vmem:[%s8 + $0xf0] sm:$0xff] %vm13744, %v13839
  %13904 = vst.msk [vmem:[%s8 + $0xf8] sm:$0xff] %vm13744, %v13840
  %13905 = vst.msk [vmem:[%s8 + $0x100] sm:$0xff] %vm13744, %v13841
  %13906 = vst.msk [vmem:[%s8 + $0x108] sm:$0xff] %vm13744, %v13842
  %13907 = vst.msk [vmem:[%s8 + $0x110] sm:$0xff] %vm13744, %v13843
  %13908 = vst.msk [vmem:[%s8 + $0x118] sm:$0xff] %vm13744, %v13844
  %13909 = vst.msk [vmem:[%s8 + $0x120] sm:$0xff] %vm13744, %v13845
  %13910 = vst.msk [vmem:[%s8 + $0x128] sm:$0xff] %vm13744, %v13846
  %13911 = vst.msk [vmem:[%s8 + $0x130] sm:$0xff] %vm13744, %v13847
  %13912 = vst.msk [vmem:[%s8 + $0x138] sm:$0xff] %vm13744, %v13848
  %13913 = vst.msk [vmem:[%s8 + $0x140] sm:$0xff] %vm13744, %v13849
  %13914 = vst.msk [vmem:[%s8 + $0x148] sm:$0xff] %vm13744, %v13850
  %13915 = vst.msk [vmem:[%s8 + $0x150] sm:$0xff] %vm13744, %v13851
  %13916 = vst.msk [vmem:[%s8 + $0x158] sm:$0xff] %vm13744, %v13852
  %13917 = vst.msk [vmem:[%s8 + $0x160] sm:$0xff] %vm13744, %v13853
  %13918 = vst.msk [vmem:[%s8 + $0x168] sm:$0xff] %vm13744, %v13854
  %13919 = vst.msk [vmem:[%s8 + $0x170] sm:$0xff] %vm13744, %v13855
  %13920 = vst.msk [vmem:[%s8 + $0x178] sm:$0xff] %vm13744, %v13856
  %13921 = vst.msk [vmem:[%s8 + $0x180] sm:$0xff] %vm13744, %v13857
  %13922 = vst.msk [vmem:[%s8 + $0x188] sm:$0xff] %vm13744, %v13858
  %13923 = vst.msk [vmem:[%s8 + $0x190] sm:$0xff] %vm13744, %v13859
  %13924 = vst.msk [vmem:[%s8 + $0x198] sm:$0xff] %vm13744, %v13860
  %13925 = vst.msk [vmem:[%s8 + $0x1a0] sm:$0xff] %vm13744, %v13861
  %13926 = vst.msk [vmem:[%s8 + $0x1a8] sm:$0xff] %vm13744, %v13862
  %13927 = vst.msk [vmem:[%s8 + $0x1b0] sm:$0xff] %vm13744, %v13863
  %13928 = vst.msk [vmem:[%s8 + $0x1b8] sm:$0xff] %vm13744, %v13864
  %13929 = vst.msk [vmem:[%s8 + $0x1c0] sm:$0xff] %vm13744, %v13865
  %13930 = vst.msk [vmem:[%s8 + $0x1c8] sm:$0xff] %vm13744, %v13866
  %13931 = vst.msk [vmem:[%s8 + $0x1d0] sm:$0xff] %vm13744, %v13867
  %13932 = vst.msk [vmem:[%s8 + $0x1d8] sm:$0xff] %vm13744, %v13868
  %13933 = vst.msk [vmem:[%s8 + $0x1e0] sm:$0xff] %vm13744, %v13869
  %13934 = vst.msk [vmem:[%s8 + $0x1e8] sm:$0xff] %vm13744, %v13870
  %13935 = vst.msk [vmem:[%s8 + $0x1f0] sm:$0xff] %vm13744, %v13871
  %13936 = vst.msk [vmem:[%s8 + $0x1f8] sm:$0xff] %vm13744, %v13872
  // Predicated region
  $region30: #{tpu_custom_call.1} parent=0 // pred_check
    _
  $region31: #{tpu_custom_call.1} parent=0 // pred_check_branch
    %13938 = sbr.rel (0) target = $region33
  $region32: #{tpu_custom_call.1} parent=0 // pred_region
    _
  $region33: #{tpu_custom_call.1} parent=0 // pred_fallthru
    _
  // Predicated region
  $region34: #{tpu_custom_call.1} parent=0 // pred_check
    _
  $region35: #{tpu_custom_call.1} parent=0 // pred_check_branch
    %13940 = sbr.rel (0) target = $region37
  $region36: #{tpu_custom_call.1} parent=0 // pred_region
    _
  $region37: #{tpu_custom_call.1} parent=0 // pred_fallthru
    _
  // Predicated region
  $region38: #{tpu_custom_call.1} parent=0 // pred_check
    _
  $region39: #{tpu_custom_call.1} parent=0 // pred_check_branch
    %13942 = sbr.rel (0) target = $region41
  $region40: #{tpu_custom_call.1} parent=0 // pred_region
    _
  $region41: #{tpu_custom_call.1} parent=0 // pred_fallthru
    _
  // Predicated region
  $region42: #{tpu_custom_call.1} parent=0 // pred_check
    _
  $region43: #{tpu_custom_call.1} parent=0 // pred_check_branch
    %13944 = sbr.rel (0) target = $region45
  $region44: #{tpu_custom_call.1} parent=0 // pred_region
    _
  $region45: #{tpu_custom_call.1} parent=0 // pred_fallthru
    _

</llo_original>
